<compile_context>
chip_gen: v7x
topology: tpu7x:2x2x1
jax: 0.10.0
libtpu: 0.0.40
codegen_flags: <defaults>
</compile_context>

<pallas_src>
import functools

import jax
import jax.numpy as jnp
from jax.experimental import pallas as pl
from jax.experimental.pallas import tpu as pltpu

EPS = 1e-5


def _conv3x3_bn(xpad_ref, w_ref, gamma, beta, N, H, W):
    """3x3 conv (9 accumulating MXU taps) + train-mode BN with folded affine.

    xpad_ref : (N, H+2, W+2, Cin) compute-dtype VMEM scratch, halo already zero
    w_ref    : (9, Cin, Cout) compute-dtype weights, tap index k = ky*3 + kx
    gamma/beta: (1, Cout) f32
    Returns  : (N*H*W, Cout) f32 (BN applied, no activation).
    """
    Cin = xpad_ref.shape[-1]
    Cout = w_ref.shape[-1]
    M = N * H * W

    # 9 accumulating K=Cin matmuls into one f32 accumulator.  No im2col slab
    # is materialized (no lane-axis concatenate / relayout, no 9x VMEM blow-up)
    # and taps come straight out of the compute-dtype scratch, so there are no
    # per-slice casts either.
    acc = jnp.zeros((M, Cout), jnp.float32)
    for k in range(9):
        dy, dx = divmod(k, 3)
        tap = xpad_ref[:, dy:dy + H, dx:dx + W, :].reshape(M, Cin)
        acc = acc + jnp.dot(tap, w_ref[k, :, :],
                            preferred_element_type=jnp.float32)

    # BatchNorm2d (training mode, biased variance).  Two-pass statistics:
    # mean first, then centered sum-of-squares -> robust against the
    # cancellation that E[x^2]-E[x]^2 suffers for large-mean activations.
    inv_m = 1.0 / float(M)
    mean = jnp.sum(acc, axis=0, keepdims=True) * inv_m
    centered = acc - mean
    var = jnp.sum(centered * centered, axis=0, keepdims=True) * inv_m
    scale = gamma * jax.lax.rsqrt(var + EPS)
    return centered * scale + beta          # folded affine: one FMA-style pass


def basic_block_kernel(x_ref, w1_ref, w2_ref, g1_ref, b1_ref, g2_ref, b2_ref,
                       o_ref, xpad_ref):
    """Fused BasicBlock: relu(BN2(conv2(relu(BN1(conv1(x))))) + x)."""
    N, H, W, C = x_ref.shape
    cdtype = xpad_ref.dtype

    x = x_ref[...]                                        # (N,H,W,C) f32, VMEM

    # Zero ONLY the 1-pixel halo of the shared padded scratch.  The interior
    # is overwritten immediately below (and again before conv2), and the halo
    # stays zero for both convs -> roughly half the store traffic of the old
    # full-buffer memset (vst is the scarcest VLIW slot).
    zrow = jnp.zeros((N, 1, W + 2, C), cdtype)
    zcol = jnp.zeros((N, H, 1, C), cdtype)
    xpad_ref[:, 0:1, :, :] = zrow
    xpad_ref[:, H + 1:H + 2, :, :] = zrow
    xpad_ref[:, 1:H + 1, 0:1, :] = zcol
    xpad_ref[:, 1:H + 1, W + 1:W + 2, :] = zcol

    # ---- conv1 + BN1 + ReLU -------------------------------------------------
    # Single cast to the compute dtype at the scratch store (cheap on v5e,
    # which has no bf16 VALU, compared to casting inside the tap loop).
    xpad_ref[:, 1:H + 1, 1:W + 1, :] = x.astype(cdtype)
    h = _conv3x3_bn(xpad_ref, w1_ref, g1_ref[...], b1_ref[...], N, H, W)
    h = jnp.maximum(h, 0.0)                               # (N*H*W, C) f32

    # ---- conv2 + BN2 + residual add + ReLU -----------------------------------
    # Reuse the SAME padded scratch (Cin == Cout): halves padded-buffer VMEM,
    # the zero halo is still valid, and h is cast to the compute dtype exactly
    # once at this store.  h / x never leave VMEM.
    xpad_ref[:, 1:H + 1, 1:W + 1, :] = h.reshape(N, H, W, C).astype(cdtype)
    out = _conv3x3_bn(xpad_ref, w2_ref, g2_ref[...], b2_ref[...], N, H, W)
    out = out + x.reshape(N * H * W, C)                   # identity (f32)
    out = jnp.maximum(out, 0.0)

    # TODO(synk): at C=4 this store is lane-sparse (4/128 lanes live).  A
    # lane-dense (N, H*W*C) out_shape would make it an unmasked vst, but the
    # required (N*H*W, C) -> (N, H*W*C) in-kernel reshape folds the minor dim
    # (a relayout Mosaic does not reliably support), so it is skipped for
    # compile safety; at real ResNet channel counts (>=128) this NHWC store is
    # already lane-dense.
    o_ref[...] = out.reshape(N, H, W, C).astype(o_ref.dtype)


def _vmem_budget_bytes(N, H, W, C, cdtype):
    """Scoped-VMEM limit derived from the actual (8,128)-padded buffer sizes."""
    def padded(shape, dtype):
        itemsize = jnp.dtype(dtype).itemsize
        dims = list(shape)
        dims[-1] = -(-dims[-1] // 128) * 128
        if len(dims) >= 2:
            dims[-2] = -(-dims[-2] // 8) * 8
        n = 1
        for d in dims:
            n *= d
        return n * itemsize

    total = (
        padded((N, H, W, C), jnp.float32)            # x input
        + padded((N, H, W, C), jnp.float32)          # output
        + padded((N, H + 2, W + 2, C), cdtype)       # shared padded scratch
        + 2 * padded((9, C, C), cdtype)              # w1, w2
        + 4 * padded((1, C), jnp.float32)            # gamma/beta x2
        + 8 * padded((N * H * W, C), jnp.float32)    # acc / h / epilogue temps
    )
    # 2x headroom for compiler-internal temporaries; never below the 32 MiB
    # default scoped limit; never above v7x's 64 MiB physical VMEM.
    return int(min(max(2 * total, 32 << 20), 64 << 20))


def basic_block_forward_nhwc(x_nhwc, params, compute_dtype):
    """Preferred entry point: keep activations NHWC end-to-end across blocks."""
    N, H, W, Cin = x_nhwc.shape
    Cout = params["w1"].shape[-1]
    assert Cin == Cout, "stride=1 / downsample=None requires inplanes == planes"
    cdtype = jnp.dtype(compute_dtype)

    vmem = pl.BlockSpec(memory_space=pltpu.MemorySpace.VMEM)
    return pl.pallas_call(
        basic_block_kernel,
        out_shape=jax.ShapeDtypeStruct((N, H, W, Cout), jnp.float32),
        in_specs=[vmem] * 7,
        out_specs=vmem,
        scratch_shapes=[
            # ONE shared padded buffer (both convs), compute dtype.
            pltpu.VMEM((N, H + 2, W + 2, Cin), cdtype),
        ],
        compiler_params=pltpu.CompilerParams(
            vmem_limit_bytes=_vmem_budget_bytes(N, H, W, Cin, cdtype)),
    )(x_nhwc,
      params["w1"].astype(cdtype),
      params["w2"].astype(cdtype),
      params["gamma1"], params["beta1"],
      params["gamma2"], params["beta2"])


@functools.partial(jax.jit, static_argnames=("compute_dtype",))
def basic_block_forward(x_nchw, params, compute_dtype=jnp.bfloat16):
    """PyTorch-parity wrapper.  Input/output are NCHW like the nn.Module.

    The two transposes below are a full HBM round-trip each; when chaining
    blocks, call `basic_block_forward_nhwc` directly and keep NHWC throughout.
    """
    x = jnp.transpose(x_nchw, (0, 2, 3, 1))          # NCHW -> NHWC
    o = basic_block_forward_nhwc(x, params, compute_dtype)
    return jnp.transpose(o, (0, 3, 1, 2))            # NHWC -> NCHW


def init_basic_block_params(key, inplanes, planes):
    """Deterministic parameter init (shapes per BasicBlock.__init__)."""
    k1, k2 = jax.random.split(key)
    w1 = 0.1 * jax.random.normal(k1, (3, 3, inplanes, planes), jnp.float32)
    w2 = 0.1 * jax.random.normal(k2, (3, 3, planes, planes), jnp.float32)
    return dict(
        # tap layout: index k = ky*3 + kx  ->  w[k] is the (Cin, Cout) tap.
        w1=w1.reshape(9, inplanes, planes),
        w2=w2.reshape(9, planes, planes),
        gamma1=jnp.ones((1, planes), jnp.float32),   # BN default weight = 1
        beta1=jnp.zeros((1, planes), jnp.float32),   # BN default bias   = 0
        gamma2=jnp.ones((1, planes), jnp.float32),
        beta2=jnp.zeros((1, planes), jnp.float32),
    )


# ------------------------- pure-JAX reference -------------------------------
def _ref_forward(x_nchw, params, compute_dtype=jnp.float32):
    x = jnp.transpose(x_nchw, (0, 2, 3, 1))          # NHWC

    def conv3x3(inp, w9):
        _, cin, cout = w9.shape
        w = w9.reshape(3, 3, cin, cout)
        return jax.lax.conv_general_dilated(
            inp.astype(compute_dtype), w.astype(compute_dtype),
            window_strides=(1, 1), padding=((1, 1), (1, 1)),
            dimension_numbers=("NHWC", "HWIO", "NHWC"),
            preferred_element_type=jnp.float32)

    def bn(inp, gamma, beta):
        mean = jnp.mean(inp, axis=(0, 1, 2), keepdims=True)
        var = jnp.mean((inp - mean) ** 2, axis=(0, 1, 2), keepdims=True)
        return (inp - mean) * jax.lax.rsqrt(var + EPS) * gamma.reshape(1, 1, 1, -1) \
            + beta.reshape(1, 1, 1, -1)

    h = jax.nn.relu(bn(conv3x3(x, params["w1"]), params["gamma1"], params["beta1"]))
    o = jax.nn.relu(bn(conv3x3(h, params["w2"]), params["gamma2"], params["beta2"]) + x)
    return jnp.transpose(o, (0, 3, 1, 2))


if __name__ == "__main__":
    key = jax.random.PRNGKey(0)
    kx, kp = jax.random.split(key)

    N, C, H, W = 2, 4, 16, 16                 # inplanes = planes = 4, stride = 1
    x = jax.random.normal(kx, (N, C, H, W), jnp.float32)   # NCHW like PyTorch
    params = init_basic_block_params(kp, inplanes=C, planes=C)

    # f32 MXU operands: tight check against the f32 reference (module semantics).
    out_f32 = jax.block_until_ready(
        basic_block_forward(x, params, compute_dtype=jnp.float32))
    ref_f32 = _ref_forward(x, params, compute_dtype=jnp.float32)
    assert out_f32.shape == (N, C, H, W)
    assert jnp.allclose(out_f32, ref_f32, rtol=1e-4, atol=1e-4), \
        "f32 kernel mismatch vs reference"

    # bf16 MXU operands (throughput default for v5e/v6e/v7x): check against a
    # reference that casts the conv operands the same way (f32 accumulation).
    out_bf16 = jax.block_until_ready(
        basic_block_forward(x, params, compute_dtype=jnp.bfloat16))
    ref_bf16 = _ref_forward(x, params, compute_dtype=jnp.bfloat16)
    assert jnp.allclose(out_bf16, ref_bf16, rtol=5e-3, atol=5e-3), \
        "bf16 kernel mismatch vs bf16 reference"

    print("KERNEL_OK")
</pallas_src>

<mosaic_0001>
module attributes {stable_mosaic.version = 11 : i64} {
  func.func @basic_block_kernel(%arg0: memref<2x16x16x4xf32, #tpu.memory_space<vmem>>, %arg1: memref<9x4x4xf32, #tpu.memory_space<vmem>>, %arg2: memref<9x4x4xf32, #tpu.memory_space<vmem>>, %arg3: memref<1x4xf32, #tpu.memory_space<vmem>>, %arg4: memref<1x4xf32, #tpu.memory_space<vmem>>, %arg5: memref<1x4xf32, #tpu.memory_space<vmem>>, %arg6: memref<1x4xf32, #tpu.memory_space<vmem>>, %arg7: memref<2x16x16x4xf32, #tpu.memory_space<vmem>>, %arg8: memref<2x18x18x4xf32, #tpu.memory_space<vmem>>) attributes {dimension_semantics = [], scalar_prefetch = 0 : i64, scratch_operands = 1 : i64, tpu.core_type = #tpu.core_type<tc>} {
    %c0 = arith.constant 0 : index
    %c0_0 = arith.constant 0 : index
    %c0_1 = arith.constant 0 : index
    %c0_2 = arith.constant 0 : index
    %0 = vector.load %arg0[%c0, %c0_0, %c0_1, %c0_2] : memref<2x16x16x4xf32, #tpu.memory_space<vmem>>, vector<2x16x16x4xf32>
    %cst = arith.constant 0.000000e+00 : f32
    %1 = vector.broadcast %cst : f32 to vector<2x1x18x4xf32>
    %cst_3 = arith.constant 0.000000e+00 : f32
    %2 = vector.broadcast %cst_3 : f32 to vector<2x16x1x4xf32>
    %c0_4 = arith.constant 0 : index
    %c0_5 = arith.constant 0 : index
    %c0_6 = arith.constant 0 : index
    %c0_7 = arith.constant 0 : index
    %3 = vector.load %arg8[%c0_4, %c0_5, %c0_6, %c0_7] : memref<2x18x18x4xf32, #tpu.memory_space<vmem>>, vector<2x1x18x4xf32>
    tpu.vector_store %arg8[%c0_4, %c0_5, %c0_6, %c0_7], %1 {strides = array<i32>} : memref<2x18x18x4xf32, #tpu.memory_space<vmem>>, vector<2x1x18x4xf32>,
    %c0_8 = arith.constant 0 : index
    %c17 = arith.constant 17 : index
    %c0_9 = arith.constant 0 : index
    %c0_10 = arith.constant 0 : index
    %4 = vector.load %arg8[%c0_8, %c17, %c0_9, %c0_10] : memref<2x18x18x4xf32, #tpu.memory_space<vmem>>, vector<2x1x18x4xf32>
    tpu.vector_store %arg8[%c0_8, %c17, %c0_9, %c0_10], %1 {strides = array<i32>} : memref<2x18x18x4xf32, #tpu.memory_space<vmem>>, vector<2x1x18x4xf32>,
    %c0_11 = arith.constant 0 : index
    %c1 = arith.constant 1 : index
    %c0_12 = arith.constant 0 : index
    %c0_13 = arith.constant 0 : index
    %5 = vector.load %arg8[%c0_11, %c1, %c0_12, %c0_13] : memref<2x18x18x4xf32, #tpu.memory_space<vmem>>, vector<2x16x1x4xf32>
    tpu.vector_store %arg8[%c0_11, %c1, %c0_12, %c0_13], %2 {strides = array<i32>} : memref<2x18x18x4xf32, #tpu.memory_space<vmem>>, vector<2x16x1x4xf32>,
    %c0_14 = arith.constant 0 : index
    %c1_15 = arith.constant 1 : index
    %c17_16 = arith.constant 17 : index
    %c0_17 = arith.constant 0 : index
    %6 = vector.load %arg8[%c0_14, %c1_15, %c17_16, %c0_17] : memref<2x18x18x4xf32, #tpu.memory_space<vmem>>, vector<2x16x1x4xf32>
    tpu.vector_store %arg8[%c0_14, %c1_15, %c17_16, %c0_17], %2 {strides = array<i32>} : memref<2x18x18x4xf32, #tpu.memory_space<vmem>>, vector<2x16x1x4xf32>,
    %c0_18 = arith.constant 0 : index
    %c1_19 = arith.constant 1 : index
    %c1_20 = arith.constant 1 : index
    %c0_21 = arith.constant 0 : index
    %7 = vector.load %arg8[%c0_18, %c1_19, %c1_20, %c0_21] : memref<2x18x18x4xf32, #tpu.memory_space<vmem>>, vector<2x16x16x4xf32>
    tpu.vector_store %arg8[%c0_18, %c1_19, %c1_20, %c0_21], %0 {strides = array<i32>} : memref<2x18x18x4xf32, #tpu.memory_space<vmem>>, vector<2x16x16x4xf32>,
    %c0_22 = arith.constant 0 : index
    %c0_23 = arith.constant 0 : index
    %8 = vector.load %arg3[%c0_22, %c0_23] : memref<1x4xf32, #tpu.memory_space<vmem>>, vector<1x4xf32>
    %c0_24 = arith.constant 0 : index
    %c0_25 = arith.constant 0 : index
    %9 = vector.load %arg4[%c0_24, %c0_25] : memref<1x4xf32, #tpu.memory_space<vmem>>, vector<1x4xf32>
    %cst_26 = arith.constant 0.000000e+00 : f32
    %10 = vector.broadcast %cst_26 : f32 to vector<512x4xf32>
    %c0_27 = arith.constant 0 : index
    %c0_28 = arith.constant 0 : index
    %c0_29 = arith.constant 0 : index
    %c0_30 = arith.constant 0 : index
    %11 = vector.load %arg8[%c0_27, %c0_28, %c0_29, %c0_30] : memref<2x18x18x4xf32, #tpu.memory_space<vmem>>, vector<2x16x16x4xf32>
    %12 = vector.shape_cast %11 : vector<2x16x16x4xf32> to vector<512x4xf32>
    %c0_31 = arith.constant 0 : index
    %c0_32 = arith.constant 0 : index
    %c0_33 = arith.constant 0 : index
    %13 = vector.load %arg1[%c0_31, %c0_32, %c0_33] : memref<9x4x4xf32, #tpu.memory_space<vmem>>, vector<1x4x4xf32>
    %14 = vector.shape_cast %13 : vector<1x4x4xf32> to vector<4x4xf32>
    %cst_34 = arith.constant dense<0.000000e+00> : vector<512x4xf32>
    %15 = tpu.matmul %12, %14, %cst_34 {dimension_numbers = #tpu.dot_dimension_numbers<[1], [0], [0], [1], [0, 0, 1, 1], [], []>} : vector<512x4xf32>, vector<4x4xf32>, vector<512x4xf32> -> vector<512x4xf32>
    %16 = arith.addf %10, %15 : vector<512x4xf32>
    %c0_35 = arith.constant 0 : index
    %c0_36 = arith.constant 0 : index
    %c1_37 = arith.constant 1 : index
    %c0_38 = arith.constant 0 : index
    %17 = vector.load %arg8[%c0_35, %c0_36, %c1_37, %c0_38] : memref<2x18x18x4xf32, #tpu.memory_space<vmem>>, vector<2x16x16x4xf32>
    %18 = vector.shape_cast %17 : vector<2x16x16x4xf32> to vector<512x4xf32>
    %c1_39 = arith.constant 1 : index
    %c0_40 = arith.constant 0 : index
    %c0_41 = arith.constant 0 : index
    %19 = vector.load %arg1[%c1_39, %c0_40, %c0_41] : memref<9x4x4xf32, #tpu.memory_space<vmem>>, vector<1x4x4xf32>
    %20 = vector.shape_cast %19 : vector<1x4x4xf32> to vector<4x4xf32>
    %cst_42 = arith.constant dense<0.000000e+00> : vector<512x4xf32>
    %21 = tpu.matmul %18, %20, %cst_42 {dimension_numbers = #tpu.dot_dimension_numbers<[1], [0], [0], [1], [0, 0, 1, 1], [], []>} : vector<512x4xf32>, vector<4x4xf32>, vector<512x4xf32> -> vector<512x4xf32>
    %22 = arith.addf %16, %21 : vector<512x4xf32>
    %c0_43 = arith.constant 0 : index
    %c0_44 = arith.constant 0 : index
    %c2 = arith.constant 2 : index
    %c0_45 = arith.constant 0 : index
    %23 = vector.load %arg8[%c0_43, %c0_44, %c2, %c0_45] : memref<2x18x18x4xf32, #tpu.memory_space<vmem>>, vector<2x16x16x4xf32>
    %24 = vector.shape_cast %23 : vector<2x16x16x4xf32> to vector<512x4xf32>
    %c2_46 = arith.constant 2 : index
    %c0_47 = arith.constant 0 : index
    %c0_48 = arith.constant 0 : index
    %25 = vector.load %arg1[%c2_46, %c0_47, %c0_48] : memref<9x4x4xf32, #tpu.memory_space<vmem>>, vector<1x4x4xf32>
    %26 = vector.shape_cast %25 : vector<1x4x4xf32> to vector<4x4xf32>
    %cst_49 = arith.constant dense<0.000000e+00> : vector<512x4xf32>
    %27 = tpu.matmul %24, %26, %cst_49 {dimension_numbers = #tpu.dot_dimension_numbers<[1], [0], [0], [1], [0, 0, 1, 1], [], []>} : vector<512x4xf32>, vector<4x4xf32>, vector<512x4xf32> -> vector<512x4xf32>
    %28 = arith.addf %22, %27 : vector<512x4xf32>
    %c0_50 = arith.constant 0 : index
    %c1_51 = arith.constant 1 : index
    %c0_52 = arith.constant 0 : index
    %c0_53 = arith.constant 0 : index
    %29 = vector.load %arg8[%c0_50, %c1_51, %c0_52, %c0_53] : memref<2x18x18x4xf32, #tpu.memory_space<vmem>>, vector<2x16x16x4xf32>
    %30 = vector.shape_cast %29 : vector<2x16x16x4xf32> to vector<512x4xf32>
    %c3 = arith.constant 3 : index
    %c0_54 = arith.constant 0 : index
    %c0_55 = arith.constant 0 : index
    %31 = vector.load %arg1[%c3, %c0_54, %c0_55] : memref<9x4x4xf32, #tpu.memory_space<vmem>>, vector<1x4x4xf32>
    %32 = vector.shape_cast %31 : vector<1x4x4xf32> to vector<4x4xf32>
    %cst_56 = arith.constant dense<0.000000e+00> : vector<512x4xf32>
    %33 = tpu.matmul %30, %32, %cst_56 {dimension_numbers = #tpu.dot_dimension_numbers<[1], [0], [0], [1], [0, 0, 1, 1], [], []>} : vector<512x4xf32>, vector<4x4xf32>, vector<512x4xf32> -> vector<512x4xf32>
    %34 = arith.addf %28, %33 : vector<512x4xf32>
    %c0_57 = arith.constant 0 : index
    %c1_58 = arith.constant 1 : index
    %c1_59 = arith.constant 1 : index
    %c0_60 = arith.constant 0 : index
    %35 = vector.load %arg8[%c0_57, %c1_58, %c1_59, %c0_60] : memref<2x18x18x4xf32, #tpu.memory_space<vmem>>, vector<2x16x16x4xf32>
    %36 = vector.shape_cast %35 : vector<2x16x16x4xf32> to vector<512x4xf32>
    %c4 = arith.constant 4 : index
    %c0_61 = arith.constant 0 : index
    %c0_62 = arith.constant 0 : index
    %37 = vector.load %arg1[%c4, %c0_61, %c0_62] : memref<9x4x4xf32, #tpu.memory_space<vmem>>, vector<1x4x4xf32>
    %38 = vector.shape_cast %37 : vector<1x4x4xf32> to vector<4x4xf32>
    %cst_63 = arith.constant dense<0.000000e+00> : vector<512x4xf32>
    %39 = tpu.matmul %36, %38, %cst_63 {dimension_numbers = #tpu.dot_dimension_numbers<[1], [0], [0], [1], [0, 0, 1, 1], [], []>} : vector<512x4xf32>, vector<4x4xf32>, vector<512x4xf32> -> vector<512x4xf32>
    %40 = arith.addf %34, %39 : vector<512x4xf32>
    %c0_64 = arith.constant 0 : index
    %c1_65 = arith.constant 1 : index
    %c2_66 = arith.constant 2 : index
    %c0_67 = arith.constant 0 : index
    %41 = vector.load %arg8[%c0_64, %c1_65, %c2_66, %c0_67] : memref<2x18x18x4xf32, #tpu.memory_space<vmem>>, vector<2x16x16x4xf32>
    %42 = vector.shape_cast %41 : vector<2x16x16x4xf32> to vector<512x4xf32>
    %c5 = arith.constant 5 : index
    %c0_68 = arith.constant 0 : index
    %c0_69 = arith.constant 0 : index
    %43 = vector.load %arg1[%c5, %c0_68, %c0_69] : memref<9x4x4xf32, #tpu.memory_space<vmem>>, vector<1x4x4xf32>
    %44 = vector.shape_cast %43 : vector<1x4x4xf32> to vector<4x4xf32>
    %cst_70 = arith.constant dense<0.000000e+00> : vector<512x4xf32>
    %45 = tpu.matmul %42, %44, %cst_70 {dimension_numbers = #tpu.dot_dimension_numbers<[1], [0], [0], [1], [0, 0, 1, 1], [], []>} : vector<512x4xf32>, vector<4x4xf32>, vector<512x4xf32> -> vector<512x4xf32>
    %46 = arith.addf %40, %45 : vector<512x4xf32>
    %c0_71 = arith.constant 0 : index
    %c2_72 = arith.constant 2 : index
    %c0_73 = arith.constant 0 : index
    %c0_74 = arith.constant 0 : index
    %47 = vector.load %arg8[%c0_71, %c2_72, %c0_73, %c0_74] : memref<2x18x18x4xf32, #tpu.memory_space<vmem>>, vector<2x16x16x4xf32>
    %48 = vector.shape_cast %47 : vector<2x16x16x4xf32> to vector<512x4xf32>
    %c6 = arith.constant 6 : index
    %c0_75 = arith.constant 0 : index
    %c0_76 = arith.constant 0 : index
    %49 = vector.load %arg1[%c6, %c0_75, %c0_76] : memref<9x4x4xf32, #tpu.memory_space<vmem>>, vector<1x4x4xf32>
    %50 = vector.shape_cast %49 : vector<1x4x4xf32> to vector<4x4xf32>
    %cst_77 = arith.constant dense<0.000000e+00> : vector<512x4xf32>
    %51 = tpu.matmul %48, %50, %cst_77 {dimension_numbers = #tpu.dot_dimension_numbers<[1], [0], [0], [1], [0, 0, 1, 1], [], []>} : vector<512x4xf32>, vector<4x4xf32>, vector<512x4xf32> -> vector<512x4xf32>
    %52 = arith.addf %46, %51 : vector<512x4xf32>
    %c0_78 = arith.constant 0 : index
    %c2_79 = arith.constant 2 : index
    %c1_80 = arith.constant 1 : index
    %c0_81 = arith.constant 0 : index
    %53 = vector.load %arg8[%c0_78, %c2_79, %c1_80, %c0_81] : memref<2x18x18x4xf32, #tpu.memory_space<vmem>>, vector<2x16x16x4xf32>
    %54 = vector.shape_cast %53 : vector<2x16x16x4xf32> to vector<512x4xf32>
    %c7 = arith.constant 7 : index
    %c0_82 = arith.constant 0 : index
    %c0_83 = arith.constant 0 : index
    %55 = vector.load %arg1[%c7, %c0_82, %c0_83] : memref<9x4x4xf32, #tpu.memory_space<vmem>>, vector<1x4x4xf32>
    %56 = vector.shape_cast %55 : vector<1x4x4xf32> to vector<4x4xf32>
    %cst_84 = arith.constant dense<0.000000e+00> : vector<512x4xf32>
    %57 = tpu.matmul %54, %56, %cst_84 {dimension_numbers = #tpu.dot_dimension_numbers<[1], [0], [0], [1], [0, 0, 1, 1], [], []>} : vector<512x4xf32>, vector<4x4xf32>, vector<512x4xf32> -> vector<512x4xf32>
    %58 = arith.addf %52, %57 : vector<512x4xf32>
    %c0_85 = arith.constant 0 : index
    %c2_86 = arith.constant 2 : index
    %c2_87 = arith.constant 2 : index
    %c0_88 = arith.constant 0 : index
    %59 = vector.load %arg8[%c0_85, %c2_86, %c2_87, %c0_88] : memref<2x18x18x4xf32, #tpu.memory_space<vmem>>, vector<2x16x16x4xf32>
    %60 = vector.shape_cast %59 : vector<2x16x16x4xf32> to vector<512x4xf32>
    %c8 = arith.constant 8 : index
    %c0_89 = arith.constant 0 : index
    %c0_90 = arith.constant 0 : index
    %61 = vector.load %arg1[%c8, %c0_89, %c0_90] : memref<9x4x4xf32, #tpu.memory_space<vmem>>, vector<1x4x4xf32>
    %62 = vector.shape_cast %61 : vector<1x4x4xf32> to vector<4x4xf32>
    %cst_91 = arith.constant dense<0.000000e+00> : vector<512x4xf32>
    %63 = tpu.matmul %60, %62, %cst_91 {dimension_numbers = #tpu.dot_dimension_numbers<[1], [0], [0], [1], [0, 0, 1, 1], [], []>} : vector<512x4xf32>, vector<4x4xf32>, vector<512x4xf32> -> vector<512x4xf32>
    %64 = arith.addf %58, %63 : vector<512x4xf32>
    %cst_92 = arith.constant dense<0.000000e+00> : vector<4xf32>
    %65 = vector.multi_reduction <add>, %64, %cst_92 [0] : vector<512x4xf32> to vector<4xf32>
    %66 = vector.shape_cast %65 : vector<4xf32> to vector<1x4xf32>
    %cst_93 = arith.constant 0.001953125 : f32
    %67 = vector.broadcast %cst_93 : f32 to vector<1x4xf32>
    %68 = arith.mulf %66, %67 : vector<1x4xf32>
    %69 = vector.broadcast %68 : vector<1x4xf32> to vector<512x4xf32>
    %70 = arith.subf %64, %69 : vector<512x4xf32>
    %71 = arith.mulf %70, %70 : vector<512x4xf32>
    %cst_94 = arith.constant dense<0.000000e+00> : vector<4xf32>
    %72 = vector.multi_reduction <add>, %71, %cst_94 [0] : vector<512x4xf32> to vector<4xf32>
    %73 = vector.shape_cast %72 : vector<4xf32> to vector<1x4xf32>
    %cst_95 = arith.constant 0.001953125 : f32
    %74 = vector.broadcast %cst_95 : f32 to vector<1x4xf32>
    %75 = arith.mulf %73, %74 : vector<1x4xf32>
    %cst_96 = arith.constant 9.99999974E-6 : f32
    %76 = vector.broadcast %cst_96 : f32 to vector<1x4xf32>
    %77 = arith.addf %75, %76 : vector<1x4xf32>
    %78 = math.rsqrt %77 : vector<1x4xf32>
    %79 = arith.mulf %8, %78 : vector<1x4xf32>
    %80 = vector.broadcast %79 : vector<1x4xf32> to vector<512x4xf32>
    %81 = arith.mulf %70, %80 : vector<512x4xf32>
    %82 = vector.broadcast %9 : vector<1x4xf32> to vector<512x4xf32>
    %83 = arith.addf %81, %82 : vector<512x4xf32>
    %cst_97 = arith.constant 0.000000e+00 : f32
    %84 = vector.broadcast %cst_97 : f32 to vector<512x4xf32>
    %85 = arith.maximumf %83, %84 : vector<512x4xf32>
    %86 = vector.shape_cast %85 : vector<512x4xf32> to vector<2x16x16x4xf32>
    %c0_98 = arith.constant 0 : index
    %c1_99 = arith.constant 1 : index
    %c1_100 = arith.constant 1 : index
    %c0_101 = arith.constant 0 : index
    %87 = vector.load %arg8[%c0_98, %c1_99, %c1_100, %c0_101] : memref<2x18x18x4xf32, #tpu.memory_space<vmem>>, vector<2x16x16x4xf32>
    tpu.vector_store %arg8[%c0_98, %c1_99, %c1_100, %c0_101], %86 {strides = array<i32>} : memref<2x18x18x4xf32, #tpu.memory_space<vmem>>, vector<2x16x16x4xf32>,
    %c0_102 = arith.constant 0 : index
    %c0_103 = arith.constant 0 : index
    %88 = vector.load %arg5[%c0_102, %c0_103] : memref<1x4xf32, #tpu.memory_space<vmem>>, vector<1x4xf32>
    %c0_104 = arith.constant 0 : index
    %c0_105 = arith.constant 0 : index
    %89 = vector.load %arg6[%c0_104, %c0_105] : memref<1x4xf32, #tpu.memory_space<vmem>>, vector<1x4xf32>
    %cst_106 = arith.constant 0.000000e+00 : f32
    %90 = vector.broadcast %cst_106 : f32 to vector<512x4xf32>
    %c0_107 = arith.constant 0 : index
    %c0_108 = arith.constant 0 : index
    %c0_109 = arith.constant 0 : index
    %c0_110 = arith.constant 0 : index
    %91 = vector.load %arg8[%c0_107, %c0_108, %c0_109, %c0_110] : memref<2x18x18x4xf32, #tpu.memory_space<vmem>>, vector<2x16x16x4xf32>
    %92 = vector.shape_cast %91 : vector<2x16x16x4xf32> to vector<512x4xf32>
    %c0_111 = arith.constant 0 : index
    %c0_112 = arith.constant 0 : index
    %c0_113 = arith.constant 0 : index
    %93 = vector.load %arg2[%c0_111, %c0_112, %c0_113] : memref<9x4x4xf32, #tpu.memory_space<vmem>>, vector<1x4x4xf32>
    %94 = vector.shape_cast %93 : vector<1x4x4xf32> to vector<4x4xf32>
    %cst_114 = arith.constant dense<0.000000e+00> : vector<512x4xf32>
    %95 = tpu.matmul %92, %94, %cst_114 {dimension_numbers = #tpu.dot_dimension_numbers<[1], [0], [0], [1], [0, 0, 1, 1], [], []>} : vector<512x4xf32>, vector<4x4xf32>, vector<512x4xf32> -> vector<512x4xf32>
    %96 = arith.addf %90, %95 : vector<512x4xf32>
    %c0_115 = arith.constant 0 : index
    %c0_116 = arith.constant 0 : index
    %c1_117 = arith.constant 1 : index
    %c0_118 = arith.constant 0 : index
    %97 = vector.load %arg8[%c0_115, %c0_116, %c1_117, %c0_118] : memref<2x18x18x4xf32, #tpu.memory_space<vmem>>, vector<2x16x16x4xf32>
    %98 = vector.shape_cast %97 : vector<2x16x16x4xf32> to vector<512x4xf32>
    %c1_119 = arith.constant 1 : index
    %c0_120 = arith.constant 0 : index
    %c0_121 = arith.constant 0 : index
    %99 = vector.load %arg2[%c1_119, %c0_120, %c0_121] : memref<9x4x4xf32, #tpu.memory_space<vmem>>, vector<1x4x4xf32>
    %100 = vector.shape_cast %99 : vector<1x4x4xf32> to vector<4x4xf32>
    %cst_122 = arith.constant dense<0.000000e+00> : vector<512x4xf32>
    %101 = tpu.matmul %98, %100, %cst_122 {dimension_numbers = #tpu.dot_dimension_numbers<[1], [0], [0], [1], [0, 0, 1, 1], [], []>} : vector<512x4xf32>, vector<4x4xf32>, vector<512x4xf32> -> vector<512x4xf32>
    %102 = arith.addf %96, %101 : vector<512x4xf32>
    %c0_123 = arith.constant 0 : index
    %c0_124 = arith.constant 0 : index
    %c2_125 = arith.constant 2 : index
    %c0_126 = arith.constant 0 : index
    %103 = vector.load %arg8[%c0_123, %c0_124, %c2_125, %c0_126] : memref<2x18x18x4xf32, #tpu.memory_space<vmem>>, vector<2x16x16x4xf32>
    %104 = vector.shape_cast %103 : vector<2x16x16x4xf32> to vector<512x4xf32>
    %c2_127 = arith.constant 2 : index
    %c0_128 = arith.constant 0 : index
    %c0_129 = arith.constant 0 : index
    %105 = vector.load %arg2[%c2_127, %c0_128, %c0_129] : memref<9x4x4xf32, #tpu.memory_space<vmem>>, vector<1x4x4xf32>
    %106 = vector.shape_cast %105 : vector<1x4x4xf32> to vector<4x4xf32>
    %cst_130 = arith.constant dense<0.000000e+00> : vector<512x4xf32>
    %107 = tpu.matmul %104, %106, %cst_130 {dimension_numbers = #tpu.dot_dimension_numbers<[1], [0], [0], [1], [0, 0, 1, 1], [], []>} : vector<512x4xf32>, vector<4x4xf32>, vector<512x4xf32> -> vector<512x4xf32>
    %108 = arith.addf %102, %107 : vector<512x4xf32>
    %c0_131 = arith.constant 0 : index
    %c1_132 = arith.constant 1 : index
    %c0_133 = arith.constant 0 : index
    %c0_134 = arith.constant 0 : index
    %109 = vector.load %arg8[%c0_131, %c1_132, %c0_133, %c0_134] : memref<2x18x18x4xf32, #tpu.memory_space<vmem>>, vector<2x16x16x4xf32>
    %110 = vector.shape_cast %109 : vector<2x16x16x4xf32> to vector<512x4xf32>
    %c3_135 = arith.constant 3 : index
    %c0_136 = arith.constant 0 : index
    %c0_137 = arith.constant 0 : index
    %111 = vector.load %arg2[%c3_135, %c0_136, %c0_137] : memref<9x4x4xf32, #tpu.memory_space<vmem>>, vector<1x4x4xf32>
    %112 = vector.shape_cast %111 : vector<1x4x4xf32> to vector<4x4xf32>
    %cst_138 = arith.constant dense<0.000000e+00> : vector<512x4xf32>
    %113 = tpu.matmul %110, %112, %cst_138 {dimension_numbers = #tpu.dot_dimension_numbers<[1], [0], [0], [1], [0, 0, 1, 1], [], []>} : vector<512x4xf32>, vector<4x4xf32>, vector<512x4xf32> -> vector<512x4xf32>
    %114 = arith.addf %108, %113 : vector<512x4xf32>
    %c0_139 = arith.constant 0 : index
    %c1_140 = arith.constant 1 : index
    %c1_141 = arith.constant 1 : index
    %c0_142 = arith.constant 0 : index
    %115 = vector.load %arg8[%c0_139, %c1_140, %c1_141, %c0_142] : memref<2x18x18x4xf32, #tpu.memory_space<vmem>>, vector<2x16x16x4xf32>
    %116 = vector.shape_cast %115 : vector<2x16x16x4xf32> to vector<512x4xf32>
    %c4_143 = arith.constant 4 : index
    %c0_144 = arith.constant 0 : index
    %c0_145 = arith.constant 0 : index
    %117 = vector.load %arg2[%c4_143, %c0_144, %c0_145] : memref<9x4x4xf32, #tpu.memory_space<vmem>>, vector<1x4x4xf32>
    %118 = vector.shape_cast %117 : vector<1x4x4xf32> to vector<4x4xf32>
    %cst_146 = arith.constant dense<0.000000e+00> : vector<512x4xf32>
    %119 = tpu.matmul %116, %118, %cst_146 {dimension_numbers = #tpu.dot_dimension_numbers<[1], [0], [0], [1], [0, 0, 1, 1], [], []>} : vector<512x4xf32>, vector<4x4xf32>, vector<512x4xf32> -> vector<512x4xf32>
    %120 = arith.addf %114, %119 : vector<512x4xf32>
    %c0_147 = arith.constant 0 : index
    %c1_148 = arith.constant 1 : index
    %c2_149 = arith.constant 2 : index
    %c0_150 = arith.constant 0 : index
    %121 = vector.load %arg8[%c0_147, %c1_148, %c2_149, %c0_150] : memref<2x18x18x4xf32, #tpu.memory_space<vmem>>, vector<2x16x16x4xf32>
    %122 = vector.shape_cast %121 : vector<2x16x16x4xf32> to vector<512x4xf32>
    %c5_151 = arith.constant 5 : index
    %c0_152 = arith.constant 0 : index
    %c0_153 = arith.constant 0 : index
    %123 = vector.load %arg2[%c5_151, %c0_152, %c0_153] : memref<9x4x4xf32, #tpu.memory_space<vmem>>, vector<1x4x4xf32>
    %124 = vector.shape_cast %123 : vector<1x4x4xf32> to vector<4x4xf32>
    %cst_154 = arith.constant dense<0.000000e+00> : vector<512x4xf32>
    %125 = tpu.matmul %122, %124, %cst_154 {dimension_numbers = #tpu.dot_dimension_numbers<[1], [0], [0], [1], [0, 0, 1, 1], [], []>} : vector<512x4xf32>, vector<4x4xf32>, vector<512x4xf32> -> vector<512x4xf32>
    %126 = arith.addf %120, %125 : vector<512x4xf32>
    %c0_155 = arith.constant 0 : index
    %c2_156 = arith.constant 2 : index
    %c0_157 = arith.constant 0 : index
    %c0_158 = arith.constant 0 : index
    %127 = vector.load %arg8[%c0_155, %c2_156, %c0_157, %c0_158] : memref<2x18x18x4xf32, #tpu.memory_space<vmem>>, vector<2x16x16x4xf32>
    %128 = vector.shape_cast %127 : vector<2x16x16x4xf32> to vector<512x4xf32>
    %c6_159 = arith.constant 6 : index
    %c0_160 = arith.constant 0 : index
    %c0_161 = arith.constant 0 : index
    %129 = vector.load %arg2[%c6_159, %c0_160, %c0_161] : memref<9x4x4xf32, #tpu.memory_space<vmem>>, vector<1x4x4xf32>
    %130 = vector.shape_cast %129 : vector<1x4x4xf32> to vector<4x4xf32>
    %cst_162 = arith.constant dense<0.000000e+00> : vector<512x4xf32>
    %131 = tpu.matmul %128, %130, %cst_162 {dimension_numbers = #tpu.dot_dimension_numbers<[1], [0], [0], [1], [0, 0, 1, 1], [], []>} : vector<512x4xf32>, vector<4x4xf32>, vector<512x4xf32> -> vector<512x4xf32>
    %132 = arith.addf %126, %131 : vector<512x4xf32>
    %c0_163 = arith.constant 0 : index
    %c2_164 = arith.constant 2 : index
    %c1_165 = arith.constant 1 : index
    %c0_166 = arith.constant 0 : index
    %133 = vector.load %arg8[%c0_163, %c2_164, %c1_165, %c0_166] : memref<2x18x18x4xf32, #tpu.memory_space<vmem>>, vector<2x16x16x4xf32>
    %134 = vector.shape_cast %133 : vector<2x16x16x4xf32> to vector<512x4xf32>
    %c7_167 = arith.constant 7 : index
    %c0_168 = arith.constant 0 : index
    %c0_169 = arith.constant 0 : index
    %135 = vector.load %arg2[%c7_167, %c0_168, %c0_169] : memref<9x4x4xf32, #tpu.memory_space<vmem>>, vector<1x4x4xf32>
    %136 = vector.shape_cast %135 : vector<1x4x4xf32> to vector<4x4xf32>
    %cst_170 = arith.constant dense<0.000000e+00> : vector<512x4xf32>
    %137 = tpu.matmul %134, %136, %cst_170 {dimension_numbers = #tpu.dot_dimension_numbers<[1], [0], [0], [1], [0, 0, 1, 1], [], []>} : vector<512x4xf32>, vector<4x4xf32>, vector<512x4xf32> -> vector<512x4xf32>
    %138 = arith.addf %132, %137 : vector<512x4xf32>
    %c0_171 = arith.constant 0 : index
    %c2_172 = arith.constant 2 : index
    %c2_173 = arith.constant 2 : index
    %c0_174 = arith.constant 0 : index
    %139 = vector.load %arg8[%c0_171, %c2_172, %c2_173, %c0_174] : memref<2x18x18x4xf32, #tpu.memory_space<vmem>>, vector<2x16x16x4xf32>
    %140 = vector.shape_cast %139 : vector<2x16x16x4xf32> to vector<512x4xf32>
    %c8_175 = arith.constant 8 : index
    %c0_176 = arith.constant 0 : index
    %c0_177 = arith.constant 0 : index
    %141 = vector.load %arg2[%c8_175, %c0_176, %c0_177] : memref<9x4x4xf32, #tpu.memory_space<vmem>>, vector<1x4x4xf32>
    %142 = vector.shape_cast %141 : vector<1x4x4xf32> to vector<4x4xf32>
    %cst_178 = arith.constant dense<0.000000e+00> : vector<512x4xf32>
    %143 = tpu.matmul %140, %142, %cst_178 {dimension_numbers = #tpu.dot_dimension_numbers<[1], [0], [0], [1], [0, 0, 1, 1], [], []>} : vector<512x4xf32>, vector<4x4xf32>, vector<512x4xf32> -> vector<512x4xf32>
    %144 = arith.addf %138, %143 : vector<512x4xf32>
    %cst_179 = arith.constant dense<0.000000e+00> : vector<4xf32>
    %145 = vector.multi_reduction <add>, %144, %cst_179 [0] : vector<512x4xf32> to vector<4xf32>
    %146 = vector.shape_cast %145 : vector<4xf32> to vector<1x4xf32>
    %cst_180 = arith.constant 0.001953125 : f32
    %147 = vector.broadcast %cst_180 : f32 to vector<1x4xf32>
    %148 = arith.mulf %146, %147 : vector<1x4xf32>
    %149 = vector.broadcast %148 : vector<1x4xf32> to vector<512x4xf32>
    %150 = arith.subf %144, %149 : vector<512x4xf32>
    %151 = arith.mulf %150, %150 : vector<512x4xf32>
    %cst_181 = arith.constant dense<0.000000e+00> : vector<4xf32>
    %152 = vector.multi_reduction <add>, %151, %cst_181 [0] : vector<512x4xf32> to vector<4xf32>
    %153 = vector.shape_cast %152 : vector<4xf32> to vector<1x4xf32>
    %cst_182 = arith.constant 0.001953125 : f32
    %154 = vector.broadcast %cst_182 : f32 to vector<1x4xf32>
    %155 = arith.mulf %153, %154 : vector<1x4xf32>
    %cst_183 = arith.constant 9.99999974E-6 : f32
    %156 = vector.broadcast %cst_183 : f32 to vector<1x4xf32>
    %157 = arith.addf %155, %156 : vector<1x4xf32>
    %158 = math.rsqrt %157 : vector<1x4xf32>
    %159 = arith.mulf %88, %158 : vector<1x4xf32>
    %160 = vector.broadcast %159 : vector<1x4xf32> to vector<512x4xf32>
    %161 = arith.mulf %150, %160 : vector<512x4xf32>
    %162 = vector.broadcast %89 : vector<1x4xf32> to vector<512x4xf32>
    %163 = arith.addf %161, %162 : vector<512x4xf32>
    %164 = vector.shape_cast %0 : vector<2x16x16x4xf32> to vector<512x4xf32>
    %165 = arith.addf %163, %164 : vector<512x4xf32>
    %cst_184 = arith.constant 0.000000e+00 : f32
    %166 = vector.broadcast %cst_184 : f32 to vector<512x4xf32>
    %167 = arith.maximumf %165, %166 : vector<512x4xf32>
    %168 = vector.shape_cast %167 : vector<512x4xf32> to vector<2x16x16x4xf32>
    %c0_185 = arith.constant 0 : index
    %c0_186 = arith.constant 0 : index
    %c0_187 = arith.constant 0 : index
    %c0_188 = arith.constant 0 : index
    %169 = vector.load %arg7[%c0_185, %c0_186, %c0_187, %c0_188] : memref<2x16x16x4xf32, #tpu.memory_space<vmem>>, vector<2x16x16x4xf32>
    tpu.vector_store %arg7[%c0_185, %c0_186, %c0_187, %c0_188], %168 {strides = array<i32>} : memref<2x16x16x4xf32, #tpu.memory_space<vmem>>, vector<2x16x16x4xf32>,
    return
  }
}

</mosaic_0001>

<llo_original>
// kernel: basic_block_forward.1
$region0: #{basic_block_forward.1}
  #allocation0 [shape = 'u32[]', space=smem, size = 0x4, offset = 0x4, fixed_abs, tag = 'smem constant byte address 0x4 - core index']
  #allocation1 [shape = 'u32[144,128]{1,0:T(1,128)}', space=vmem, size = 0x12000, scoped, tag = 'internal scratch']
  #allocation2 [shape = 'f32[2,18,18,4]{3,2,1,0:T(8,128)}', space=vmem, size = 0x6c000, scoped, tag = 'scratch operand']
  %s0 = inlined_call_operand.vmem [shape: f32[2,16,16,4], index: 0, kind: input, shape index: {}]
  %s1 = inlined_call_operand.vmem [shape: f32[9,4,4], index: 1, kind: input, shape index: {}]
  %s2 = inlined_call_operand.vmem [shape: f32[9,4,4], index: 2, kind: input, shape index: {}]
  %s3 = inlined_call_operand.vmem [shape: f32[1,4], index: 3, kind: input, shape index: {}]
  %s4 = inlined_call_operand.vmem [shape: f32[1,4], index: 4, kind: input, shape index: {}]
  %s5 = inlined_call_operand.vmem [shape: f32[1,4], index: 5, kind: input, shape index: {}]
  %s6 = inlined_call_operand.vmem [shape: f32[1,4], index: 6, kind: input, shape index: {}]
  %s7 = inlined_call_operand.vmem [shape: f32[2,16,16,4], index: 7, kind: output, shape index: {}]
  %s8 = sld [smem:[#allocation0]]
  $region38: #{basic_block_forward.1} parent=0
    _
  %s10 = ssub.s32 1, %s8
  %s11 = scalar_select 0, %s10, %s8
  // Predicated region
  $region2: #{basic_block_forward.1} parent=0 // pred_check
    _
  $region3: #{basic_block_forward.1} parent=0 // pred_check_branch
    %13 = sbr.rel (0) target = $region5
  $region4: #{basic_block_forward.1} parent=0 // pred_region
    _
  $region5: #{basic_block_forward.1} parent=0 // pred_fallthru
    _
  // Predicated region
  $region6: #{basic_block_forward.1} parent=0 // pred_check
    _
  $region7: #{basic_block_forward.1} parent=0 // pred_check_branch
    %15 = sbr.rel (0) target = $region9
  $region8: #{basic_block_forward.1} parent=0 // pred_region
    _
  $region9: #{basic_block_forward.1} parent=0 // pred_fallthru
    _
  // Predicated region
  $region10: #{basic_block_forward.1} parent=0 // pred_check
    _
  $region11: #{basic_block_forward.1} parent=0 // pred_check_branch
    %17 = sbr.rel (0) target = $region13
  $region12: #{basic_block_forward.1} parent=0 // pred_region
    _
  $region13: #{basic_block_forward.1} parent=0 // pred_fallthru
    _
  // Predicated region
  $region14: #{basic_block_forward.1} parent=0 // pred_check
    _
  $region15: #{basic_block_forward.1} parent=0 // pred_check_branch
    %19 = sbr.rel (0) target = $region17
  $region16: #{basic_block_forward.1} parent=0 // pred_region
    _
  $region17: #{basic_block_forward.1} parent=0 // pred_fallthru
    _
  // Predicated region
  $region18: #{basic_block_forward.1} parent=0 // pred_check
    _
  $region19: #{basic_block_forward.1} parent=0 // pred_check_branch
    %21 = sbr.rel (0) target = $region21
  $region20: #{basic_block_forward.1} parent=0 // pred_region
    _
  $region21: #{basic_block_forward.1} parent=0 // pred_fallthru
    _
  // Predicated region
  $region22: #{basic_block_forward.1} parent=0 // pred_check
    _
  $region23: #{basic_block_forward.1} parent=0 // pred_check_branch
    %23 = sbr.rel (0) target = $region25
  $region24: #{basic_block_forward.1} parent=0 // pred_region
    _
  $region25: #{basic_block_forward.1} parent=0 // pred_fallthru
    _
  // Predicated region
  $region26: #{basic_block_forward.1} parent=0 // pred_check
    _
  $region27: #{basic_block_forward.1} parent=0 // pred_check_branch
    %25 = sbr.rel (0) target = $region29
  $region28: #{basic_block_forward.1} parent=0 // pred_region
    _
  $region29: #{basic_block_forward.1} parent=0 // pred_fallthru
    _
  %v26 = vld [vmem:[%s0] sm:$0xff]
  %v27 = vld [vmem:[%s0 + $0x8] sm:$0xff]
  %v28 = vld [vmem:[%s0 + $0x10] sm:$0xff]
  %v29 = vld [vmem:[%s0 + $0x18] sm:$0xff]
  %v30 = vld [vmem:[%s0 + $0x20] sm:$0xff]
  %v31 = vld [vmem:[%s0 + $0x28] sm:$0xff]
  %v32 = vld [vmem:[%s0 + $0x30] sm:$0xff]
  %v33 = vld [vmem:[%s0 + $0x38] sm:$0xff]
  %v34 = vld [vmem:[%s0 + $0x40] sm:$0xff]
  %v35 = vld [vmem:[%s0 + $0x48] sm:$0xff]
  %v36 = vld [vmem:[%s0 + $0x50] sm:$0xff]
  %v37 = vld [vmem:[%s0 + $0x58] sm:$0xff]
  %v38 = vld [vmem:[%s0 + $0x60] sm:$0xff]
  %v39 = vld [vmem:[%s0 + $0x68] sm:$0xff]
  %v40 = vld [vmem:[%s0 + $0x70] sm:$0xff]
  %v41 = vld [vmem:[%s0 + $0x78] sm:$0xff]
  %v42 = vld [vmem:[%s0 + $0x80] sm:$0xff]
  %v43 = vld [vmem:[%s0 + $0x88] sm:$0xff]
  %v44 = vld [vmem:[%s0 + $0x90] sm:$0xff]
  %v45 = vld [vmem:[%s0 + $0x98] sm:$0xff]
  %v46 = vld [vmem:[%s0 + $0xa0] sm:$0xff]
  %v47 = vld [vmem:[%s0 + $0xa8] sm:$0xff]
  %v48 = vld [vmem:[%s0 + $0xb0] sm:$0xff]
  %v49 = vld [vmem:[%s0 + $0xb8] sm:$0xff]
  %v50 = vld [vmem:[%s0 + $0xc0] sm:$0xff]
  %v51 = vld [vmem:[%s0 + $0xc8] sm:$0xff]
  %v52 = vld [vmem:[%s0 + $0xd0] sm:$0xff]
  %v53 = vld [vmem:[%s0 + $0xd8] sm:$0xff]
  %v54 = vld [vmem:[%s0 + $0xe0] sm:$0xff]
  %v55 = vld [vmem:[%s0 + $0xe8] sm:$0xff]
  %v56 = vld [vmem:[%s0 + $0xf0] sm:$0xff]
  %v57 = vld [vmem:[%s0 + $0xf8] sm:$0xff]
  %v58 = vld [vmem:[%s0 + $0x100] sm:$0xff]
  %v59 = vld [vmem:[%s0 + $0x108] sm:$0xff]
  %v60 = vld [vmem:[%s0 + $0x110] sm:$0xff]
  %v61 = vld [vmem:[%s0 + $0x118] sm:$0xff]
  %v62 = vld [vmem:[%s0 + $0x120] sm:$0xff]
  %v63 = vld [vmem:[%s0 + $0x128] sm:$0xff]
  %v64 = vld [vmem:[%s0 + $0x130] sm:$0xff]
  %v65 = vld [vmem:[%s0 + $0x138] sm:$0xff]
  %v66 = vld [vmem:[%s0 + $0x140] sm:$0xff]
  %v67 = vld [vmem:[%s0 + $0x148] sm:$0xff]
  %v68 = vld [vmem:[%s0 + $0x150] sm:$0xff]
  %v69 = vld [vmem:[%s0 + $0x158] sm:$0xff]
  %v70 = vld [vmem:[%s0 + $0x160] sm:$0xff]
  %v71 = vld [vmem:[%s0 + $0x168] sm:$0xff]
  %v72 = vld [vmem:[%s0 + $0x170] sm:$0xff]
  %v73 = vld [vmem:[%s0 + $0x178] sm:$0xff]
  %v74 = vld [vmem:[%s0 + $0x180] sm:$0xff]
  %v75 = vld [vmem:[%s0 + $0x188] sm:$0xff]
  %v76 = vld [vmem:[%s0 + $0x190] sm:$0xff]
  %v77 = vld [vmem:[%s0 + $0x198] sm:$0xff]
  %v78 = vld [vmem:[%s0 + $0x1a0] sm:$0xff]
  %v79 = vld [vmem:[%s0 + $0x1a8] sm:$0xff]
  %v80 = vld [vmem:[%s0 + $0x1b0] sm:$0xff]
  %v81 = vld [vmem:[%s0 + $0x1b8] sm:$0xff]
  %v82 = vld [vmem:[%s0 + $0x1c0] sm:$0xff]
  %v83 = vld [vmem:[%s0 + $0x1c8] sm:$0xff]
  %v84 = vld [vmem:[%s0 + $0x1d0] sm:$0xff]
  %v85 = vld [vmem:[%s0 + $0x1d8] sm:$0xff]
  %v86 = vld [vmem:[%s0 + $0x1e0] sm:$0xff]
  %v87 = vld [vmem:[%s0 + $0x1e8] sm:$0xff]
  %v88 = vld [vmem:[%s0 + $0x1f0] sm:$0xff]
  %v89 = vld [vmem:[%s0 + $0x1f8] sm:$0xff]
  %vm90 = vcmask 31744
  %91 = vst.msk [vmem:[#allocation2] sm:$0xff] %vm90, 0.0
  %92 = vst.msk [vmem:[#allocation2 + $0x8] sm:$0xff] %vm90, 0.0
  %vm93 = vcmask 25600
  %94 = vst.msk [vmem:[#allocation2 + $0x10] sm:$0x3] %vm93, 0.0
  %95 = vst.msk [vmem:[#allocation2 + $0x1b0] sm:$0xff] %vm90, 0.0
  %96 = vst.msk [vmem:[#allocation2 + $0x1b8] sm:$0xff] %vm90, 0.0
  %97 = vst.msk [vmem:[#allocation2 + $0x1c0] sm:$0x3] %vm93, 0.0
  %s98 = scalar_lea.vmem [#allocation2], 408
  %99 = vst.msk [vmem:[%s98] sm:$0xff] %vm90, 0.0
  %100 = vst.msk [vmem:[%s98 + $0x8] sm:$0xff] %vm90, 0.0
  %101 = vst.msk [vmem:[%s98 + $0x10] sm:$0x3] %vm93, 0.0
  %102 = vst.msk [vmem:[%s98 + $0x1b0] sm:$0xff] %vm90, 0.0
  %103 = vst.msk [vmem:[%s98 + $0x1b8] sm:$0xff] %vm90, 0.0
  %104 = vst.msk [vmem:[%s98 + $0x1c0] sm:$0x3] %vm93, 0.0
  %s105 = scalar_lea.vmem [#allocation2], 24
  %vm106 = vcmask 24576
  %107 = vst.msk [vmem:[%s105] sm:$0x1] %vm106, 0.0
  %108 = vst.msk [vmem:[%s105 + $0x18] sm:$0x1] %vm106, 0.0
  %109 = vst.msk [vmem:[%s105 + $0x30] sm:$0x1] %vm106, 0.0
  %110 = vst.msk [vmem:[%s105 + $0x48] sm:$0x1] %vm106, 0.0
  %111 = vst.msk [vmem:[%s105 + $0x60] sm:$0x1] %vm106, 0.0
  %112 = vst.msk [vmem:[%s105 + $0x78] sm:$0x1] %vm106, 0.0
  %113 = vst.msk [vmem:[%s105 + $0x90] sm:$0x1] %vm106, 0.0
  %114 = vst.msk [vmem:[%s105 + $0xa8] sm:$0x1] %vm106, 0.0
  %115 = vst.msk [vmem:[%s105 + $0xc0] sm:$0x1] %vm106, 0.0
  %116 = vst.msk [vmem:[%s105 + $0xd8] sm:$0x1] %vm106, 0.0
  %117 = vst.msk [vmem:[%s105 + $0xf0] sm:$0x1] %vm106, 0.0
  %118 = vst.msk [vmem:[%s105 + $0x108] sm:$0x1] %vm106, 0.0
  %119 = vst.msk [vmem:[%s105 + $0x120] sm:$0x1] %vm106, 0.0
  %120 = vst.msk [vmem:[%s105 + $0x138] sm:$0x1] %vm106, 0.0
  %121 = vst.msk [vmem:[%s105 + $0x150] sm:$0x1] %vm106, 0.0
  %122 = vst.msk [vmem:[%s105 + $0x168] sm:$0x1] %vm106, 0.0
  %123 = vst.msk [vmem:[%s105 + $0x1b0] sm:$0x1] %vm106, 0.0
  %124 = vst.msk [vmem:[%s105 + $0x1c8] sm:$0x1] %vm106, 0.0
  %125 = vst.msk [vmem:[%s105 + $0x1e0] sm:$0x1] %vm106, 0.0
  %126 = vst.msk [vmem:[%s105 + $0x1f8] sm:$0x1] %vm106, 0.0
  %127 = vst.msk [vmem:[%s105 + $0x210] sm:$0x1] %vm106, 0.0
  %128 = vst.msk [vmem:[%s105 + $0x228] sm:$0x1] %vm106, 0.0
  %129 = vst.msk [vmem:[%s105 + $0x240] sm:$0x1] %vm106, 0.0
  %130 = vst.msk [vmem:[%s105 + $0x258] sm:$0x1] %vm106, 0.0
  %131 = vst.msk [vmem:[%s105 + $0x270] sm:$0x1] %vm106, 0.0
  %132 = vst.msk [vmem:[%s105 + $0x288] sm:$0x1] %vm106, 0.0
  %133 = vst.msk [vmem:[%s105 + $0x2a0] sm:$0x1] %vm106, 0.0
  %134 = vst.msk [vmem:[%s105 + $0x2b8] sm:$0x1] %vm106, 0.0
  %135 = vst.msk [vmem:[%s105 + $0x2d0] sm:$0x1] %vm106, 0.0
  %136 = vst.msk [vmem:[%s105 + $0x2e8] sm:$0x1] %vm106, 0.0
  %137 = vst.msk [vmem:[%s105 + $0x300] sm:$0x1] %vm106, 0.0
  %138 = vst.msk [vmem:[%s105 + $0x318] sm:$0x1] %vm106, 0.0
  %139 = vst.msk [vmem:[%s105 + $0x11] sm:$0x1] %vm106, 0.0
  %140 = vst.msk [vmem:[%s105 + $0x29] sm:$0x1] %vm106, 0.0
  %141 = vst.msk [vmem:[%s105 + $0x41] sm:$0x1] %vm106, 0.0
  %142 = vst.msk [vmem:[%s105 + $0x59] sm:$0x1] %vm106, 0.0
  %143 = vst.msk [vmem:[%s105 + $0x71] sm:$0x1] %vm106, 0.0
  %144 = vst.msk [vmem:[%s105 + $0x89] sm:$0x1] %vm106, 0.0
  %145 = vst.msk [vmem:[%s105 + $0xa1] sm:$0x1] %vm106, 0.0
  %146 = vst.msk [vmem:[%s105 + $0xb9] sm:$0x1] %vm106, 0.0
  %147 = vst.msk [vmem:[%s105 + $0xd1] sm:$0x1] %vm106, 0.0
  %148 = vst.msk [vmem:[%s105 + $0xe9] sm:$0x1] %vm106, 0.0
  %149 = vst.msk [vmem:[%s105 + $0x101] sm:$0x1] %vm106, 0.0
  %150 = vst.msk [vmem:[%s105 + $0x119] sm:$0x1] %vm106, 0.0
  %151 = vst.msk [vmem:[%s105 + $0x131] sm:$0x1] %vm106, 0.0
  %152 = vst.msk [vmem:[%s105 + $0x149] sm:$0x1] %vm106, 0.0
  %153 = vst.msk [vmem:[%s105 + $0x161] sm:$0x1] %vm106, 0.0
  %154 = vst.msk [vmem:[%s105 + $0x179] sm:$0x1] %vm106, 0.0
  %155 = vst.msk [vmem:[%s105 + $0x1c1] sm:$0x1] %vm106, 0.0
  %156 = vst.msk [vmem:[%s105 + $0x1d9] sm:$0x1] %vm106, 0.0
  %157 = vst.msk [vmem:[%s105 + $0x1f1] sm:$0x1] %vm106, 0.0
  %158 = vst.msk [vmem:[%s105 + $0x209] sm:$0x1] %vm106, 0.0
  %159 = vst.msk [vmem:[%s105 + $0x221] sm:$0x1] %vm106, 0.0
  %160 = vst.msk [vmem:[%s105 + $0x239] sm:$0x1] %vm106, 0.0
  %161 = vst.msk [vmem:[%s105 + $0x251] sm:$0x1] %vm106, 0.0
  %162 = vst.msk [vmem:[%s105 + $0x269] sm:$0x1] %vm106, 0.0
  %163 = vst.msk [vmem:[%s105 + $0x281] sm:$0x1] %vm106, 0.0
  %164 = vst.msk [vmem:[%s105 + $0x299] sm:$0x1] %vm106, 0.0
  %165 = vst.msk [vmem:[%s105 + $0x2b1] sm:$0x1] %vm106, 0.0
  %166 = vst.msk [vmem:[%s105 + $0x2c9] sm:$0x1] %vm106, 0.0
  %167 = vst.msk [vmem:[%s105 + $0x2e1] sm:$0x1] %vm106, 0.0
  %168 = vst.msk [vmem:[%s105 + $0x2f9] sm:$0x1] %vm106, 0.0
  %169 = vst.msk [vmem:[%s105 + $0x311] sm:$0x1] %vm106, 0.0
  %170 = vst.msk [vmem:[%s105 + $0x329] sm:$0x1] %vm106, 0.0
  %171 = vst.msk [vmem:[%s105 + $0x1] sm:$0xff] %vm90, %v26
  %172 = vst.msk [vmem:[%s105 + $0x9] sm:$0xff] %vm90, %v27
  %173 = vst.msk [vmem:[%s105 + $0x19] sm:$0xff] %vm90, %v28
  %174 = vst.msk [vmem:[%s105 + $0x21] sm:$0xff] %vm90, %v29
  %175 = vst.msk [vmem:[%s105 + $0x31] sm:$0xff] %vm90, %v30
  %176 = vst.msk [vmem:[%s105 + $0x39] sm:$0xff] %vm90, %v31
  %177 = vst.msk [vmem:[%s105 + $0x49] sm:$0xff] %vm90, %v32
  %178 = vst.msk [vmem:[%s105 + $0x51] sm:$0xff] %vm90, %v33
  %179 = vst.msk [vmem:[%s105 + $0x61] sm:$0xff] %vm90, %v34
  %180 = vst.msk [vmem:[%s105 + $0x69] sm:$0xff] %vm90, %v35
  %181 = vst.msk [vmem:[%s105 + $0x79] sm:$0xff] %vm90, %v36
  %182 = vst.msk [vmem:[%s105 + $0x81] sm:$0xff] %vm90, %v37
  %183 = vst.msk [vmem:[%s105 + $0x91] sm:$0xff] %vm90, %v38
  %184 = vst.msk [vmem:[%s105 + $0x99] sm:$0xff] %vm90, %v39
  %185 = vst.msk [vmem:[%s105 + $0xa9] sm:$0xff] %vm90, %v40
  %186 = vst.msk [vmem:[%s105 + $0xb1] sm:$0xff] %vm90, %v41
  %187 = vst.msk [vmem:[%s105 + $0xc1] sm:$0xff] %vm90, %v42
  %188 = vst.msk [vmem:[%s105 + $0xc9] sm:$0xff] %vm90, %v43
  %189 = vst.msk [vmem:[%s105 + $0xd9] sm:$0xff] %vm90, %v44
  %190 = vst.msk [vmem:[%s105 + $0xe1] sm:$0xff] %vm90, %v45
  %191 = vst.msk [vmem:[%s105 + $0xf1] sm:$0xff] %vm90, %v46
  %192 = vst.msk [vmem:[%s105 + $0xf9] sm:$0xff] %vm90, %v47
  %193 = vst.msk [vmem:[%s105 + $0x109] sm:$0xff] %vm90, %v48
  %194 = vst.msk [vmem:[%s105 + $0x111] sm:$0xff] %vm90, %v49
  %195 = vst.msk [vmem:[%s105 + $0x121] sm:$0xff] %vm90, %v50
  %196 = vst.msk [vmem:[%s105 + $0x129] sm:$0xff] %vm90, %v51
  %197 = vst.msk [vmem:[%s105 + $0x139] sm:$0xff] %vm90, %v52
  %198 = vst.msk [vmem:[%s105 + $0x141] sm:$0xff] %vm90, %v53
  %199 = vst.msk [vmem:[%s105 + $0x151] sm:$0xff] %vm90, %v54
  %200 = vst.msk [vmem:[%s105 + $0x159] sm:$0xff] %vm90, %v55
  %201 = vst.msk [vmem:[%s105 + $0x169] sm:$0xff] %vm90, %v56
  %202 = vst.msk [vmem:[%s105 + $0x171] sm:$0xff] %vm90, %v57
  %203 = vst.msk [vmem:[%s105 + $0x1b1] sm:$0xff] %vm90, %v58
  %204 = vst.msk [vmem:[%s105 + $0x1b9] sm:$0xff] %vm90, %v59
  %205 = vst.msk [vmem:[%s105 + $0x1c9] sm:$0xff] %vm90, %v60
  %206 = vst.msk [vmem:[%s105 + $0x1d1] sm:$0xff] %vm90, %v61
  %207 = vst.msk [vmem:[%s105 + $0x1e1] sm:$0xff] %vm90, %v62
  %208 = vst.msk [vmem:[%s105 + $0x1e9] sm:$0xff] %vm90, %v63
  %209 = vst.msk [vmem:[%s105 + $0x1f9] sm:$0xff] %vm90, %v64
  %210 = vst.msk [vmem:[%s105 + $0x201] sm:$0xff] %vm90, %v65
  %211 = vst.msk [vmem:[%s105 + $0x211] sm:$0xff] %vm90, %v66
  %212 = vst.msk [vmem:[%s105 + $0x219] sm:$0xff] %vm90, %v67
  %213 = vst.msk [vmem:[%s105 + $0x229] sm:$0xff] %vm90, %v68
  %214 = vst.msk [vmem:[%s105 + $0x231] sm:$0xff] %vm90, %v69
  %215 = vst.msk [vmem:[%s105 + $0x241] sm:$0xff] %vm90, %v70
  %216 = vst.msk [vmem:[%s105 + $0x249] sm:$0xff] %vm90, %v71
  %217 = vst.msk [vmem:[%s105 + $0x259] sm:$0xff] %vm90, %v72
  %218 = vst.msk [vmem:[%s105 + $0x261] sm:$0xff] %vm90, %v73
  %219 = vst.msk [vmem:[%s105 + $0x271] sm:$0xff] %vm90, %v74
  %220 = vst.msk [vmem:[%s105 + $0x279] sm:$0xff] %vm90, %v75
  %221 = vst.msk [vmem:[%s105 + $0x289] sm:$0xff] %vm90, %v76
  %222 = vst.msk [vmem:[%s105 + $0x291] sm:$0xff] %vm90, %v77
  %223 = vst.msk [vmem:[%s105 + $0x2a1] sm:$0xff] %vm90, %v78
  %224 = vst.msk [vmem:[%s105 + $0x2a9] sm:$0xff] %vm90, %v79
  %225 = vst.msk [vmem:[%s105 + $0x2b9] sm:$0xff] %vm90, %v80
  %226 = vst.msk [vmem:[%s105 + $0x2c1] sm:$0xff] %vm90, %v81
  %227 = vst.msk [vmem:[%s105 + $0x2d1] sm:$0xff] %vm90, %v82
  %228 = vst.msk [vmem:[%s105 + $0x2d9] sm:$0xff] %vm90, %v83
  %229 = vst.msk [vmem:[%s105 + $0x2e9] sm:$0xff] %vm90, %v84
  %230 = vst.msk [vmem:[%s105 + $0x2f1] sm:$0xff] %vm90, %v85
  %231 = vst.msk [vmem:[%s105 + $0x301] sm:$0xff] %vm90, %v86
  %232 = vst.msk [vmem:[%s105 + $0x309] sm:$0xff] %vm90, %v87
  %233 = vst.msk [vmem:[%s105 + $0x319] sm:$0xff] %vm90, %v88
  %234 = vst.msk [vmem:[%s105 + $0x321] sm:$0xff] %vm90, %v89
  %v235 = vld [vmem:[%s3] sm:$0x1]
  %v236 = vld [vmem:[%s4] sm:$0x1]
  %v237 = vld [vmem:[#allocation2] sm:$0xff]
  %v238 = vld [vmem:[#allocation2 + $0x8] sm:$0xff]
  %v239 = vld [vmem:[#allocation2 + $0x18] sm:$0xff]
  %v240 = vld [vmem:[#allocation2 + $0x20] sm:$0xff]
  %v241 = vld [vmem:[#allocation2 + $0x30] sm:$0xff]
  %v242 = vld [vmem:[#allocation2 + $0x38] sm:$0xff]
  %v243 = vld [vmem:[#allocation2 + $0x48] sm:$0xff]
  %v244 = vld [vmem:[#allocation2 + $0x50] sm:$0xff]
  %v245 = vld [vmem:[#allocation2 + $0x60] sm:$0xff]
  %v246 = vld [vmem:[#allocation2 + $0x68] sm:$0xff]
  %v247 = vld [vmem:[#allocation2 + $0x78] sm:$0xff]
  %v248 = vld [vmem:[#allocation2 + $0x80] sm:$0xff]
  %v249 = vld [vmem:[#allocation2 + $0x90] sm:$0xff]
  %v250 = vld [vmem:[#allocation2 + $0x98] sm:$0xff]
  %v251 = vld [vmem:[#allocation2 + $0xa8] sm:$0xff]
  %v252 = vld [vmem:[#allocation2 + $0xb0] sm:$0xff]
  %v253 = vld [vmem:[#allocation2 + $0xc0] sm:$0xff]
  %v254 = vld [vmem:[#allocation2 + $0xc8] sm:$0xff]
  %v255 = vld [vmem:[#allocation2 + $0xd8] sm:$0xff]
  %v256 = vld [vmem:[#allocation2 + $0xe0] sm:$0xff]
  %v257 = vld [vmem:[#allocation2 + $0xf0] sm:$0xff]
  %v258 = vld [vmem:[#allocation2 + $0xf8] sm:$0xff]
  %v259 = vld [vmem:[#allocation2 + $0x108] sm:$0xff]
  %v260 = vld [vmem:[#allocation2 + $0x110] sm:$0xff]
  %v261 = vld [vmem:[#allocation2 + $0x120] sm:$0xff]
  %v262 = vld [vmem:[#allocation2 + $0x128] sm:$0xff]
  %v263 = vld [vmem:[#allocation2 + $0x138] sm:$0xff]
  %v264 = vld [vmem:[#allocation2 + $0x140] sm:$0xff]
  %v265 = vld [vmem:[#allocation2 + $0x150] sm:$0xff]
  %v266 = vld [vmem:[#allocation2 + $0x158] sm:$0xff]
  %v267 = vld [vmem:[#allocation2 + $0x168] sm:$0xff]
  %v268 = vld [vmem:[#allocation2 + $0x170] sm:$0xff]
  %v269 = vld [vmem:[#allocation2 + $0x1b0] sm:$0xff]
  %v270 = vld [vmem:[#allocation2 + $0x1b8] sm:$0xff]
  %v271 = vld [vmem:[#allocation2 + $0x1c8] sm:$0xff]
  %v272 = vld [vmem:[#allocation2 + $0x1d0] sm:$0xff]
  %v273 = vld [vmem:[#allocation2 + $0x1e0] sm:$0xff]
  %v274 = vld [vmem:[#allocation2 + $0x1e8] sm:$0xff]
  %v275 = vld [vmem:[#allocation2 + $0x1f8] sm:$0xff]
  %v276 = vld [vmem:[#allocation2 + $0x200] sm:$0xff]
  %v277 = vld [vmem:[#allocation2 + $0x210] sm:$0xff]
  %v278 = vld [vmem:[#allocation2 + $0x218] sm:$0xff]
  %v279 = vld [vmem:[#allocation2 + $0x228] sm:$0xff]
  %v280 = vld [vmem:[#allocation2 + $0x230] sm:$0xff]
  %v281 = vld [vmem:[#allocation2 + $0x240] sm:$0xff]
  %v282 = vld [vmem:[#allocation2 + $0x248] sm:$0xff]
  %v283 = vld [vmem:[#allocation2 + $0x258] sm:$0xff]
  %v284 = vld [vmem:[#allocation2 + $0x260] sm:$0xff]
  %v285 = vld [vmem:[#allocation2 + $0x270] sm:$0xff]
  %v286 = vld [vmem:[#allocation2 + $0x278] sm:$0xff]
  %v287 = vld [vmem:[#allocation2 + $0x288] sm:$0xff]
  %v288 = vld [vmem:[#allocation2 + $0x290] sm:$0xff]
  %v289 = vld [vmem:[#allocation2 + $0x2a0] sm:$0xff]
  %v290 = vld [vmem:[#allocation2 + $0x2a8] sm:$0xff]
  %v291 = vld [vmem:[#allocation2 + $0x2b8] sm:$0xff]
  %v292 = vld [vmem:[#allocation2 + $0x2c0] sm:$0xff]
  %v293 = vld [vmem:[#allocation2 + $0x2d0] sm:$0xff]
  %v294 = vld [vmem:[#allocation2 + $0x2d8] sm:$0xff]
  %v295 = vld [vmem:[#allocation2 + $0x2e8] sm:$0xff]
  %v296 = vld [vmem:[#allocation2 + $0x2f0] sm:$0xff]
  %v297 = vld [vmem:[#allocation2 + $0x300] sm:$0xff]
  %v298 = vld [vmem:[#allocation2 + $0x308] sm:$0xff]
  %v299 = vld [vmem:[#allocation2 + $0x318] sm:$0xff]
  %v300 = vld [vmem:[#allocation2 + $0x320] sm:$0xff]
  %v301 = vld [vmem:[%s1] sm:$0xf]
  %v302 = vld [vmem:[#allocation2 + $0x1] sm:$0xff]
  %v303 = vld [vmem:[#allocation2 + $0x9] sm:$0xff]
  %v304 = vld [vmem:[#allocation2 + $0x19] sm:$0xff]
  %v305 = vld [vmem:[#allocation2 + $0x21] sm:$0xff]
  %v306 = vld [vmem:[#allocation2 + $0x31] sm:$0xff]
  %v307 = vld [vmem:[#allocation2 + $0x39] sm:$0xff]
  %v308 = vld [vmem:[#allocation2 + $0x49] sm:$0xff]
  %v309 = vld [vmem:[#allocation2 + $0x51] sm:$0xff]
  %v310 = vld [vmem:[#allocation2 + $0x61] sm:$0xff]
  %v311 = vld [vmem:[#allocation2 + $0x69] sm:$0xff]
  %v312 = vld [vmem:[#allocation2 + $0x79] sm:$0xff]
  %v313 = vld [vmem:[#allocation2 + $0x81] sm:$0xff]
  %v314 = vld [vmem:[#allocation2 + $0x91] sm:$0xff]
  %v315 = vld [vmem:[#allocation2 + $0x99] sm:$0xff]
  %v316 = vld [vmem:[#allocation2 + $0xa9] sm:$0xff]
  %v317 = vld [vmem:[#allocation2 + $0xb1] sm:$0xff]
  %v318 = vld [vmem:[#allocation2 + $0xc1] sm:$0xff]
  %v319 = vld [vmem:[#allocation2 + $0xc9] sm:$0xff]
  %v320 = vld [vmem:[#allocation2 + $0xd9] sm:$0xff]
  %v321 = vld [vmem:[#allocation2 + $0xe1] sm:$0xff]
  %v322 = vld [vmem:[#allocation2 + $0xf1] sm:$0xff]
  %v323 = vld [vmem:[#allocation2 + $0xf9] sm:$0xff]
  %v324 = vld [vmem:[#allocation2 + $0x109] sm:$0xff]
  %v325 = vld [vmem:[#allocation2 + $0x111] sm:$0xff]
  %v326 = vld [vmem:[#allocation2 + $0x121] sm:$0xff]
  %v327 = vld [vmem:[#allocation2 + $0x129] sm:$0xff]
  %v328 = vld [vmem:[#allocation2 + $0x139] sm:$0xff]
  %v329 = vld [vmem:[#allocation2 + $0x141] sm:$0xff]
  %v330 = vld [vmem:[#allocation2 + $0x151] sm:$0xff]
  %v331 = vld [vmem:[#allocation2 + $0x159] sm:$0xff]
  %v332 = vld [vmem:[#allocation2 + $0x169] sm:$0xff]
  %v333 = vld [vmem:[#allocation2 + $0x171] sm:$0xff]
  %v334 = vld [vmem:[#allocation2 + $0x1b1] sm:$0xff]
  %v335 = vld [vmem:[#allocation2 + $0x1b9] sm:$0xff]
  %v336 = vld [vmem:[#allocation2 + $0x1c9] sm:$0xff]
  %v337 = vld [vmem:[#allocation2 + $0x1d1] sm:$0xff]
  %v338 = vld [vmem:[#allocation2 + $0x1e1] sm:$0xff]
  %v339 = vld [vmem:[#allocation2 + $0x1e9] sm:$0xff]
  %v340 = vld [vmem:[#allocation2 + $0x1f9] sm:$0xff]
  %v341 = vld [vmem:[#allocation2 + $0x201] sm:$0xff]
  %v342 = vld [vmem:[#allocation2 + $0x211] sm:$0xff]
  %v343 = vld [vmem:[#allocation2 + $0x219] sm:$0xff]
  %v344 = vld [vmem:[#allocation2 + $0x229] sm:$0xff]
  %v345 = vld [vmem:[#allocation2 + $0x231] sm:$0xff]
  %v346 = vld [vmem:[#allocation2 + $0x241] sm:$0xff]
  %v347 = vld [vmem:[#allocation2 + $0x249] sm:$0xff]
  %v348 = vld [vmem:[#allocation2 + $0x259] sm:$0xff]
  %v349 = vld [vmem:[#allocation2 + $0x261] sm:$0xff]
  %v350 = vld [vmem:[#allocation2 + $0x271] sm:$0xff]
  %v351 = vld [vmem:[#allocation2 + $0x279] sm:$0xff]
  %v352 = vld [vmem:[#allocation2 + $0x289] sm:$0xff]
  %v353 = vld [vmem:[#allocation2 + $0x291] sm:$0xff]
  %v354 = vld [vmem:[#allocation2 + $0x2a1] sm:$0xff]
  %v355 = vld [vmem:[#allocation2 + $0x2a9] sm:$0xff]
  %v356 = vld [vmem:[#allocation2 + $0x2b9] sm:$0xff]
  %v357 = vld [vmem:[#allocation2 + $0x2c1] sm:$0xff]
  %v358 = vld [vmem:[#allocation2 + $0x2d1] sm:$0xff]
  %v359 = vld [vmem:[#allocation2 + $0x2d9] sm:$0xff]
  %v360 = vld [vmem:[#allocation2 + $0x2e9] sm:$0xff]
  %v361 = vld [vmem:[#allocation2 + $0x2f1] sm:$0xff]
  %v362 = vld [vmem:[#allocation2 + $0x301] sm:$0xff]
  %v363 = vld [vmem:[#allocation2 + $0x309] sm:$0xff]
  %v364 = vld [vmem:[#allocation2 + $0x319] sm:$0xff]
  %v365 = vld [vmem:[#allocation2 + $0x321] sm:$0xff]
  %s366 = scalar_lea.vmem %s1, 4
  %v367 = vld [vmem:[%s366] sm:$0xf]
  %v369 = vsel %vm90, %v302, 0
  %v372 = vsel %vm90, %v303, 0
  %v375 = vsel %vm90, %v304, 0
  %v378 = vsel %vm90, %v305, 0
  %v381 = vsel %vm90, %v306, 0
  %v384 = vsel %vm90, %v307, 0
  %v387 = vsel %vm90, %v308, 0
  %v390 = vsel %vm90, %v309, 0
  %v393 = vsel %vm90, %v310, 0
  %v396 = vsel %vm90, %v311, 0
  %v399 = vsel %vm90, %v312, 0
  %v402 = vsel %vm90, %v313, 0
  %v405 = vsel %vm90, %v314, 0
  %v408 = vsel %vm90, %v315, 0
  %v411 = vsel %vm90, %v316, 0
  %v414 = vsel %vm90, %v317, 0
  %v417 = vsel %vm90, %v318, 0
  %v420 = vsel %vm90, %v319, 0
  %v423 = vsel %vm90, %v320, 0
  %v426 = vsel %vm90, %v321, 0
  %v429 = vsel %vm90, %v322, 0
  %v432 = vsel %vm90, %v323, 0
  %v435 = vsel %vm90, %v324, 0
  %v438 = vsel %vm90, %v325, 0
  %v441 = vsel %vm90, %v326, 0
  %v444 = vsel %vm90, %v327, 0
  %v447 = vsel %vm90, %v328, 0
  %v450 = vsel %vm90, %v329, 0
  %v453 = vsel %vm90, %v330, 0
  %v456 = vsel %vm90, %v331, 0
  %v459 = vsel %vm90, %v332, 0
  %v462 = vsel %vm90, %v333, 0
  %v465 = vsel %vm90, %v334, 0
  %v468 = vsel %vm90, %v335, 0
  %v471 = vsel %vm90, %v336, 0
  %v474 = vsel %vm90, %v337, 0
  %v477 = vsel %vm90, %v338, 0
  %v480 = vsel %vm90, %v339, 0
  %v483 = vsel %vm90, %v340, 0
  %v486 = vsel %vm90, %v341, 0
  %v489 = vsel %vm90, %v342, 0
  %v492 = vsel %vm90, %v343, 0
  %v495 = vsel %vm90, %v344, 0
  %v498 = vsel %vm90, %v345, 0
  %v501 = vsel %vm90, %v346, 0
  %v504 = vsel %vm90, %v347, 0
  %v507 = vsel %vm90, %v348, 0
  %v510 = vsel %vm90, %v349, 0
  %v513 = vsel %vm90, %v350, 0
  %v516 = vsel %vm90, %v351, 0
  %v519 = vsel %vm90, %v352, 0
  %v522 = vsel %vm90, %v353, 0
  %v525 = vsel %vm90, %v354, 0
  %v528 = vsel %vm90, %v355, 0
  %v531 = vsel %vm90, %v356, 0
  %v534 = vsel %vm90, %v357, 0
  %v537 = vsel %vm90, %v358, 0
  %v540 = vsel %vm90, %v359, 0
  %v543 = vsel %vm90, %v360, 0
  %v546 = vsel %vm90, %v361, 0
  %v549 = vsel %vm90, %v362, 0
  %v552 = vsel %vm90, %v363, 0
  %v555 = vsel %vm90, %v364, 0
  %v558 = vsel %vm90, %v365, 0
  %vm560 = vcmask 1043456
  %v562 = vsel %vm560, %v367, 0
  %564 = vmatprep.subr.mxu0 0.0
  %565 = vmatpush1.msra.mxu0 %v562
  %566 = vmatprep.subr.mxu0 0.0
  %567 = vmatpush1.msra.mxu0 0.0
  %568 = vmatprep.subr.mxu0 0.0
  %569 = vmatpush1.msra.mxu0 0.0
  %570 = vmatprep.subr.mxu0 0.0
  %571 = vmatpush1.msra.mxu0 0.0
  %572 = vmatprep.subr.mxu0 0.0
  %573 = vmatpush1.msra.mxu0 0.0
  %574 = vmatprep.subr.mxu0 0.0
  %575 = vmatpush1.msra.mxu0 0.0
  %576 = vmatprep.subr.mxu0 0.0
  %577 = vmatpush1.msra.mxu0 0.0
  %578 = vmatprep.subr.mxu0 0.0
  %579 = vmatpush1.msra.mxu0 0.0
  %580 = vmatprep.subr.mxu0 0.0
  %581 = vmatpush1.msra.mxu0 0.0
  %582 = vmatprep.subr.mxu0 0.0
  %583 = vmatpush1.msra.mxu0 0.0
  %584 = vmatprep.subr.mxu0 0.0
  %585 = vmatpush1.msra.mxu0 0.0
  %586 = vmatprep.subr.mxu0 0.0
  %587 = vmatpush1.msra.mxu0 0.0
  %588 = vmatprep.subr.mxu0 0.0
  %589 = vmatpush1.msra.mxu0 0.0
  %590 = vmatprep.subr.mxu0 0.0
  %591 = vmatpush1.msra.mxu0 0.0
  %592 = vmatprep.subr.mxu0 0.0
  %593 = vmatpush1.msra.mxu0 0.0
  %594 = vmatprep.subr.mxu0 0.0
  %595 = vmatpush1.msra.mxu0 0.0
  %596 = vmatprep.subr.mxu0 0.0
  %597 = vmatpush1.msra.mxu0 0.0
  %598 = vmatprep.subr.mxu0 0.0
  %599 = vmatpush1.msra.mxu0 0.0
  %600 = vmatprep.subr.mxu0 0.0
  %601 = vmatpush1.msra.mxu0 0.0
  %602 = vmatprep.subr.mxu0 0.0
  %603 = vmatpush1.msra.mxu0 0.0
  %604 = vmatprep.subr.mxu0 0.0
  %605 = vmatpush1.msra.mxu0 0.0
  %606 = vmatprep.subr.mxu0 0.0
  %607 = vmatpush1.msra.mxu0 0.0
  %608 = vmatprep.subr.mxu0 0.0
  %609 = vmatpush1.msra.mxu0 0.0
  %610 = vmatprep.subr.mxu0 0.0
  %611 = vmatpush1.msra.mxu0 0.0
  %612 = vmatprep.subr.mxu0 0.0
  %613 = vmatpush1.msra.mxu0 0.0
  %614 = vmatprep.subr.mxu0 0.0
  %615 = vmatpush1.msra.mxu0 0.0
  %616 = vmatprep.subr.mxu0 0.0
  %617 = vmatpush1.msra.mxu0 0.0
  %618 = vmatprep.subr.mxu0 0.0
  %619 = vmatpush1.msra.mxu0 0.0
  %620 = vmatprep.subr.mxu0 0.0
  %621 = vmatpush1.msra.mxu0 0.0
  %622 = vmatprep.subr.mxu0 0.0
  %623 = vmatpush1.msra.mxu0 0.0
  %624 = vmatprep.subr.mxu0 0.0
  %625 = vmatpush1.msra.mxu0 0.0
  %626 = vmatprep.subr.mxu0 0.0
  %627 = vmatpush1.msra.mxu0 0.0
  %628 = vmatprep.mubr.f32.mxu0 0.0
  %629 = vmatmul.mubr.f32.gmra.mrb[0].mxu0 %v369
  %v630 = vpop.f32.mrb[0].mxu0
  %v631 = vadd.f32 0.0, %v630
  %v632 = vpop.f32.mrb[0].mxu0
  %633 = vmatprep.mubr.f32.mxu0 0.0
  %634 = vmatmul.mubr.f32.gmra.mrb[0].mxu0 %v372
  %v635 = vpop.f32.mrb[0].mxu0
  %v636 = vadd.f32 0.0, %v635
  %v637 = vpop.f32.mrb[0].mxu0
  %638 = vmatprep.mubr.f32.mxu0 0.0
  %639 = vmatmul.mubr.f32.gmra.mrb[0].mxu0 %v375
  %v640 = vpop.f32.mrb[0].mxu0
  %v641 = vadd.f32 0.0, %v640
  %v642 = vpop.f32.mrb[0].mxu0
  %643 = vmatprep.mubr.f32.mxu0 0.0
  %644 = vmatmul.mubr.f32.gmra.mrb[0].mxu0 %v378
  %v645 = vpop.f32.mrb[0].mxu0
  %v646 = vadd.f32 0.0, %v645
  %v647 = vpop.f32.mrb[0].mxu0
  %648 = vmatprep.mubr.f32.mxu0 0.0
  %649 = vmatmul.mubr.f32.gmra.mrb[0].mxu0 %v381
  %v650 = vpop.f32.mrb[0].mxu0
  %v651 = vadd.f32 0.0, %v650
  %v652 = vpop.f32.mrb[0].mxu0
  %653 = vmatprep.mubr.f32.mxu0 0.0
  %654 = vmatmul.mubr.f32.gmra.mrb[0].mxu0 %v384
  %v655 = vpop.f32.mrb[0].mxu0
  %v656 = vadd.f32 0.0, %v655
  %v657 = vpop.f32.mrb[0].mxu0
  %658 = vmatprep.mubr.f32.mxu0 0.0
  %659 = vmatmul.mubr.f32.gmra.mrb[0].mxu0 %v387
  %v660 = vpop.f32.mrb[0].mxu0
  %v661 = vadd.f32 0.0, %v660
  %v662 = vpop.f32.mrb[0].mxu0
  %663 = vmatprep.mubr.f32.mxu0 0.0
  %664 = vmatmul.mubr.f32.gmra.mrb[0].mxu0 %v390
  %v665 = vpop.f32.mrb[0].mxu0
  %v666 = vadd.f32 0.0, %v665
  %v667 = vpop.f32.mrb[0].mxu0
  %668 = vmatprep.mubr.f32.mxu0 0.0
  %669 = vmatmul.mubr.f32.gmra.mrb[0].mxu0 %v393
  %v670 = vpop.f32.mrb[0].mxu0
  %v671 = vadd.f32 0.0, %v670
  %v672 = vpop.f32.mrb[0].mxu0
  %673 = vmatprep.mubr.f32.mxu0 0.0
  %674 = vmatmul.mubr.f32.gmra.mrb[0].mxu0 %v396
  %v675 = vpop.f32.mrb[0].mxu0
  %v676 = vadd.f32 0.0, %v675
  %v677 = vpop.f32.mrb[0].mxu0
  %678 = vmatprep.mubr.f32.mxu0 0.0
  %679 = vmatmul.mubr.f32.gmra.mrb[0].mxu0 %v399
  %v680 = vpop.f32.mrb[0].mxu0
  %v681 = vadd.f32 0.0, %v680
  %v682 = vpop.f32.mrb[0].mxu0
  %683 = vmatprep.mubr.f32.mxu0 0.0
  %684 = vmatmul.mubr.f32.gmra.mrb[0].mxu0 %v402
  %v685 = vpop.f32.mrb[0].mxu0
  %v686 = vadd.f32 0.0, %v685
  %v687 = vpop.f32.mrb[0].mxu0
  %688 = vmatprep.mubr.f32.mxu0 0.0
  %689 = vmatmul.mubr.f32.gmra.mrb[0].mxu0 %v405
  %v690 = vpop.f32.mrb[0].mxu0
  %v691 = vadd.f32 0.0, %v690
  %v692 = vpop.f32.mrb[0].mxu0
  %693 = vmatprep.mubr.f32.mxu0 0.0
  %694 = vmatmul.mubr.f32.gmra.mrb[0].mxu0 %v408
  %v695 = vpop.f32.mrb[0].mxu0
  %v696 = vadd.f32 0.0, %v695
  %v697 = vpop.f32.mrb[0].mxu0
  %698 = vmatprep.mubr.f32.mxu0 0.0
  %699 = vmatmul.mubr.f32.gmra.mrb[0].mxu0 %v411
  %v700 = vpop.f32.mrb[0].mxu0
  %v701 = vadd.f32 0.0, %v700
  %v702 = vpop.f32.mrb[0].mxu0
  %703 = vmatprep.mubr.f32.mxu0 0.0
  %704 = vmatmul.mubr.f32.gmra.mrb[0].mxu0 %v414
  %v705 = vpop.f32.mrb[0].mxu0
  %v706 = vadd.f32 0.0, %v705
  %v707 = vpop.f32.mrb[0].mxu0
  %708 = vmatprep.mubr.f32.mxu0 0.0
  %709 = vmatmul.mubr.f32.gmra.mrb[0].mxu0 %v417
  %v710 = vpop.f32.mrb[0].mxu0
  %v711 = vadd.f32 0.0, %v710
  %v712 = vpop.f32.mrb[0].mxu0
  %713 = vmatprep.mubr.f32.mxu0 0.0
  %714 = vmatmul.mubr.f32.gmra.mrb[0].mxu0 %v420
  %v715 = vpop.f32.mrb[0].mxu0
  %v716 = vadd.f32 0.0, %v715
  %v717 = vpop.f32.mrb[0].mxu0
  %718 = vmatprep.mubr.f32.mxu0 0.0
  %719 = vmatmul.mubr.f32.gmra.mrb[0].mxu0 %v423
  %v720 = vpop.f32.mrb[0].mxu0
  %v721 = vadd.f32 0.0, %v720
  %v722 = vpop.f32.mrb[0].mxu0
  %723 = vmatprep.mubr.f32.mxu0 0.0
  %724 = vmatmul.mubr.f32.gmra.mrb[0].mxu0 %v426
  %v725 = vpop.f32.mrb[0].mxu0
  %v726 = vadd.f32 0.0, %v725
  %v727 = vpop.f32.mrb[0].mxu0
  %728 = vmatprep.mubr.f32.mxu0 0.0
  %729 = vmatmul.mubr.f32.gmra.mrb[0].mxu0 %v429
  %v730 = vpop.f32.mrb[0].mxu0
  %v731 = vadd.f32 0.0, %v730
  %v732 = vpop.f32.mrb[0].mxu0
  %733 = vmatprep.mubr.f32.mxu0 0.0
  %734 = vmatmul.mubr.f32.gmra.mrb[0].mxu0 %v432
  %v735 = vpop.f32.mrb[0].mxu0
  %v736 = vadd.f32 0.0, %v735
  %v737 = vpop.f32.mrb[0].mxu0
  %738 = vmatprep.mubr.f32.mxu0 0.0
  %739 = vmatmul.mubr.f32.gmra.mrb[0].mxu0 %v435
  %v740 = vpop.f32.mrb[0].mxu0
  %v741 = vadd.f32 0.0, %v740
  %v742 = vpop.f32.mrb[0].mxu0
  %743 = vmatprep.mubr.f32.mxu0 0.0
  %744 = vmatmul.mubr.f32.gmra.mrb[0].mxu0 %v438
  %v745 = vpop.f32.mrb[0].mxu0
  %v746 = vadd.f32 0.0, %v745
  %v747 = vpop.f32.mrb[0].mxu0
  %748 = vmatprep.mubr.f32.mxu0 0.0
  %749 = vmatmul.mubr.f32.gmra.mrb[0].mxu0 %v441
  %v750 = vpop.f32.mrb[0].mxu0
  %v751 = vadd.f32 0.0, %v750
  %v752 = vpop.f32.mrb[0].mxu0
  %753 = vmatprep.mubr.f32.mxu0 0.0
  %754 = vmatmul.mubr.f32.gmra.mrb[0].mxu0 %v444
  %v755 = vpop.f32.mrb[0].mxu0
  %v756 = vadd.f32 0.0, %v755
  %v757 = vpop.f32.mrb[0].mxu0
  %758 = vmatprep.mubr.f32.mxu0 0.0
  %759 = vmatmul.mubr.f32.gmra.mrb[0].mxu0 %v447
  %v760 = vpop.f32.mrb[0].mxu0
  %v761 = vadd.f32 0.0, %v760
  %v762 = vpop.f32.mrb[0].mxu0
  %763 = vmatprep.mubr.f32.mxu0 0.0
  %764 = vmatmul.mubr.f32.gmra.mrb[0].mxu0 %v450
  %v765 = vpop.f32.mrb[0].mxu0
  %v766 = vadd.f32 0.0, %v765
  %v767 = vpop.f32.mrb[0].mxu0
  %768 = vmatprep.mubr.f32.mxu0 0.0
  %769 = vmatmul.mubr.f32.gmra.mrb[0].mxu0 %v453
  %v770 = vpop.f32.mrb[0].mxu0
  %v771 = vadd.f32 0.0, %v770
  %v772 = vpop.f32.mrb[0].mxu0
  %773 = vmatprep.mubr.f32.mxu0 0.0
  %774 = vmatmul.mubr.f32.gmra.mrb[0].mxu0 %v456
  %v775 = vpop.f32.mrb[0].mxu0
  %v776 = vadd.f32 0.0, %v775
  %v777 = vpop.f32.mrb[0].mxu0
  %778 = vmatprep.mubr.f32.mxu0 0.0
  %779 = vmatmul.mubr.f32.gmra.mrb[0].mxu0 %v459
  %v780 = vpop.f32.mrb[0].mxu0
  %v781 = vadd.f32 0.0, %v780
  %v782 = vpop.f32.mrb[0].mxu0
  %783 = vmatprep.mubr.f32.mxu0 0.0
  %784 = vmatmul.mubr.f32.gmra.mrb[0].mxu0 %v462
  %v785 = vpop.f32.mrb[0].mxu0
  %v786 = vadd.f32 0.0, %v785
  %v787 = vpop.f32.mrb[0].mxu0
  %788 = vmatprep.mubr.f32.mxu0 0.0
  %789 = vmatmul.mubr.f32.gmra.mrb[0].mxu0 %v465
  %v790 = vpop.f32.mrb[0].mxu0
  %v791 = vadd.f32 0.0, %v790
  %v792 = vpop.f32.mrb[0].mxu0
  %793 = vmatprep.mubr.f32.mxu0 0.0
  %794 = vmatmul.mubr.f32.gmra.mrb[0].mxu0 %v468
  %v795 = vpop.f32.mrb[0].mxu0
  %v796 = vadd.f32 0.0, %v795
  %v797 = vpop.f32.mrb[0].mxu0
  %798 = vmatprep.mubr.f32.mxu0 0.0
  %799 = vmatmul.mubr.f32.gmra.mrb[0].mxu0 %v471
  %v800 = vpop.f32.mrb[0].mxu0
  %v801 = vadd.f32 0.0, %v800
  %v802 = vpop.f32.mrb[0].mxu0
  %803 = vmatprep.mubr.f32.mxu0 0.0
  %804 = vmatmul.mubr.f32.gmra.mrb[0].mxu0 %v474
  %v805 = vpop.f32.mrb[0].mxu0
  %v806 = vadd.f32 0.0, %v805
  %v807 = vpop.f32.mrb[0].mxu0
  %808 = vmatprep.mubr.f32.mxu0 0.0
  %809 = vmatmul.mubr.f32.gmra.mrb[0].mxu0 %v477
  %v810 = vpop.f32.mrb[0].mxu0
  %v811 = vadd.f32 0.0, %v810
  %v812 = vpop.f32.mrb[0].mxu0
  %813 = vmatprep.mubr.f32.mxu0 0.0
  %814 = vmatmul.mubr.f32.gmra.mrb[0].mxu0 %v480
  %v815 = vpop.f32.mrb[0].mxu0
  %v816 = vadd.f32 0.0, %v815
  %v817 = vpop.f32.mrb[0].mxu0
  %818 = vmatprep.mubr.f32.mxu0 0.0
  %819 = vmatmul.mubr.f32.gmra.mrb[0].mxu0 %v483
  %v820 = vpop.f32.mrb[0].mxu0
  %v821 = vadd.f32 0.0, %v820
  %v822 = vpop.f32.mrb[0].mxu0
  %823 = vmatprep.mubr.f32.mxu0 0.0
  %824 = vmatmul.mubr.f32.gmra.mrb[0].mxu0 %v486
  %v825 = vpop.f32.mrb[0].mxu0
  %v826 = vadd.f32 0.0, %v825
  %v827 = vpop.f32.mrb[0].mxu0
  %828 = vmatprep.mubr.f32.mxu0 0.0
  %829 = vmatmul.mubr.f32.gmra.mrb[0].mxu0 %v489
  %v830 = vpop.f32.mrb[0].mxu0
  %v831 = vadd.f32 0.0, %v830
  %v832 = vpop.f32.mrb[0].mxu0
  %833 = vmatprep.mubr.f32.mxu0 0.0
  %834 = vmatmul.mubr.f32.gmra.mrb[0].mxu0 %v492
  %v835 = vpop.f32.mrb[0].mxu0
  %v836 = vadd.f32 0.0, %v835
  %v837 = vpop.f32.mrb[0].mxu0
  %838 = vmatprep.mubr.f32.mxu0 0.0
  %839 = vmatmul.mubr.f32.gmra.mrb[0].mxu0 %v495
  %v840 = vpop.f32.mrb[0].mxu0
  %v841 = vadd.f32 0.0, %v840
  %v842 = vpop.f32.mrb[0].mxu0
  %843 = vmatprep.mubr.f32.mxu0 0.0
  %844 = vmatmul.mubr.f32.gmra.mrb[0].mxu0 %v498
  %v845 = vpop.f32.mrb[0].mxu0
  %v846 = vadd.f32 0.0, %v845
  %v847 = vpop.f32.mrb[0].mxu0
  %848 = vmatprep.mubr.f32.mxu0 0.0
  %849 = vmatmul.mubr.f32.gmra.mrb[0].mxu0 %v501
  %v850 = vpop.f32.mrb[0].mxu0
  %v851 = vadd.f32 0.0, %v850
  %v852 = vpop.f32.mrb[0].mxu0
  %853 = vmatprep.mubr.f32.mxu0 0.0
  %854 = vmatmul.mubr.f32.gmra.mrb[0].mxu0 %v504
  %v855 = vpop.f32.mrb[0].mxu0
  %v856 = vadd.f32 0.0, %v855
  %v857 = vpop.f32.mrb[0].mxu0
  %858 = vmatprep.mubr.f32.mxu0 0.0
  %859 = vmatmul.mubr.f32.gmra.mrb[0].mxu0 %v507
  %v860 = vpop.f32.mrb[0].mxu0
  %v861 = vadd.f32 0.0, %v860
  %v862 = vpop.f32.mrb[0].mxu0
  %863 = vmatprep.mubr.f32.mxu0 0.0
  %864 = vmatmul.mubr.f32.gmra.mrb[0].mxu0 %v510
  %v865 = vpop.f32.mrb[0].mxu0
  %v866 = vadd.f32 0.0, %v865
  %v867 = vpop.f32.mrb[0].mxu0
  %868 = vmatprep.mubr.f32.mxu0 0.0
  %869 = vmatmul.mubr.f32.gmra.mrb[0].mxu0 %v513
  %v870 = vpop.f32.mrb[0].mxu0
  %v871 = vadd.f32 0.0, %v870
  %v872 = vpop.f32.mrb[0].mxu0
  %873 = vmatprep.mubr.f32.mxu0 0.0
  %874 = vmatmul.mubr.f32.gmra.mrb[0].mxu0 %v516
  %v875 = vpop.f32.mrb[0].mxu0
  %v876 = vadd.f32 0.0, %v875
  %v877 = vpop.f32.mrb[0].mxu0
  %878 = vmatprep.mubr.f32.mxu0 0.0
  %879 = vmatmul.mubr.f32.gmra.mrb[0].mxu0 %v519
  %v880 = vpop.f32.mrb[0].mxu0
  %v881 = vadd.f32 0.0, %v880
  %v882 = vpop.f32.mrb[0].mxu0
  %883 = vmatprep.mubr.f32.mxu0 0.0
  %884 = vmatmul.mubr.f32.gmra.mrb[0].mxu0 %v522
  %v885 = vpop.f32.mrb[0].mxu0
  %v886 = vadd.f32 0.0, %v885
  %v887 = vpop.f32.mrb[0].mxu0
  %888 = vmatprep.mubr.f32.mxu0 0.0
  %889 = vmatmul.mubr.f32.gmra.mrb[0].mxu0 %v525
  %v890 = vpop.f32.mrb[0].mxu0
  %v891 = vadd.f32 0.0, %v890
  %v892 = vpop.f32.mrb[0].mxu0
  %893 = vmatprep.mubr.f32.mxu0 0.0
  %894 = vmatmul.mubr.f32.gmra.mrb[0].mxu0 %v528
  %v895 = vpop.f32.mrb[0].mxu0
  %v896 = vadd.f32 0.0, %v895
  %v897 = vpop.f32.mrb[0].mxu0
  %898 = vmatprep.mubr.f32.mxu0 0.0
  %899 = vmatmul.mubr.f32.gmra.mrb[0].mxu0 %v531
  %v900 = vpop.f32.mrb[0].mxu0
  %v901 = vadd.f32 0.0, %v900
  %v902 = vpop.f32.mrb[0].mxu0
  %903 = vmatprep.mubr.f32.mxu0 0.0
  %904 = vmatmul.mubr.f32.gmra.mrb[0].mxu0 %v534
  %v905 = vpop.f32.mrb[0].mxu0
  %v906 = vadd.f32 0.0, %v905
  %v907 = vpop.f32.mrb[0].mxu0
  %908 = vmatprep.mubr.f32.mxu0 0.0
  %909 = vmatmul.mubr.f32.gmra.mrb[0].mxu0 %v537
  %v910 = vpop.f32.mrb[0].mxu0
  %v911 = vadd.f32 0.0, %v910
  %v912 = vpop.f32.mrb[0].mxu0
  %913 = vmatprep.mubr.f32.mxu0 0.0
  %914 = vmatmul.mubr.f32.gmra.mrb[0].mxu0 %v540
  %v915 = vpop.f32.mrb[0].mxu0
  %v916 = vadd.f32 0.0, %v915
  %v917 = vpop.f32.mrb[0].mxu0
  %918 = vmatprep.mubr.f32.mxu0 0.0
  %919 = vmatmul.mubr.f32.gmra.mrb[0].mxu0 %v543
  %v920 = vpop.f32.mrb[0].mxu0
  %v921 = vadd.f32 0.0, %v920
  %v922 = vpop.f32.mrb[0].mxu0
  %923 = vmatprep.mubr.f32.mxu0 0.0
  %924 = vmatmul.mubr.f32.gmra.mrb[0].mxu0 %v546
  %v925 = vpop.f32.mrb[0].mxu0
  %v926 = vadd.f32 0.0, %v925
  %v927 = vpop.f32.mrb[0].mxu0
  %928 = vmatprep.mubr.f32.mxu0 0.0
  %929 = vmatmul.mubr.f32.gmra.mrb[0].mxu0 %v549
  %v930 = vpop.f32.mrb[0].mxu0
  %v931 = vadd.f32 0.0, %v930
  %v932 = vpop.f32.mrb[0].mxu0
  %933 = vmatprep.mubr.f32.mxu0 0.0
  %934 = vmatmul.mubr.f32.gmra.mrb[0].mxu0 %v552
  %v935 = vpop.f32.mrb[0].mxu0
  %v936 = vadd.f32 0.0, %v935
  %v937 = vpop.f32.mrb[0].mxu0
  %938 = vmatprep.mubr.f32.mxu0 0.0
  %939 = vmatmul.mubr.f32.gmra.mrb[0].mxu0 %v555
  %v940 = vpop.f32.mrb[0].mxu0
  %v941 = vadd.f32 0.0, %v940
  %v942 = vpop.f32.mrb[0].mxu0
  %943 = vmatprep.mubr.f32.mxu0 0.0
  %944 = vmatmul.mubr.f32.gmra.mrb[0].mxu0 %v558
  %v945 = vpop.f32.mrb[0].mxu0
  %v946 = vadd.f32 0.0, %v945
  %v947 = vpop.f32.mrb[0].mxu0
  %948 = vdwg.mxu0
  %v950 = vsel %vm90, %v237, 0
  %v953 = vsel %vm90, %v238, 0
  %v956 = vsel %vm90, %v239, 0
  %v959 = vsel %vm90, %v240, 0
  %v962 = vsel %vm90, %v241, 0
  %v965 = vsel %vm90, %v242, 0
  %v968 = vsel %vm90, %v243, 0
  %v971 = vsel %vm90, %v244, 0
  %v974 = vsel %vm90, %v245, 0
  %v977 = vsel %vm90, %v246, 0
  %v980 = vsel %vm90, %v247, 0
  %v983 = vsel %vm90, %v248, 0
  %v986 = vsel %vm90, %v249, 0
  %v989 = vsel %vm90, %v250, 0
  %v992 = vsel %vm90, %v251, 0
  %v995 = vsel %vm90, %v252, 0
  %v998 = vsel %vm90, %v253, 0
  %v1001 = vsel %vm90, %v254, 0
  %v1004 = vsel %vm90, %v255, 0
  %v1007 = vsel %vm90, %v256, 0
  %v1010 = vsel %vm90, %v257, 0
  %v1013 = vsel %vm90, %v258, 0
  %v1016 = vsel %vm90, %v259, 0
  %v1019 = vsel %vm90, %v260, 0
  %v1022 = vsel %vm90, %v261, 0
  %v1025 = vsel %vm90, %v262, 0
  %v1028 = vsel %vm90, %v263, 0
  %v1031 = vsel %vm90, %v264, 0
  %v1034 = vsel %vm90, %v265, 0
  %v1037 = vsel %vm90, %v266, 0
  %v1040 = vsel %vm90, %v267, 0
  %v1043 = vsel %vm90, %v268, 0
  %v1046 = vsel %vm90, %v269, 0
  %v1049 = vsel %vm90, %v270, 0
  %v1052 = vsel %vm90, %v271, 0
  %v1055 = vsel %vm90, %v272, 0
  %v1058 = vsel %vm90, %v273, 0
  %v1061 = vsel %vm90, %v274, 0
  %v1064 = vsel %vm90, %v275, 0
  %v1067 = vsel %vm90, %v276, 0
  %v1070 = vsel %vm90, %v277, 0
  %v1073 = vsel %vm90, %v278, 0
  %v1076 = vsel %vm90, %v279, 0
  %v1079 = vsel %vm90, %v280, 0
  %v1082 = vsel %vm90, %v281, 0
  %v1085 = vsel %vm90, %v282, 0
  %v1088 = vsel %vm90, %v283, 0
  %v1091 = vsel %vm90, %v284, 0
  %v1094 = vsel %vm90, %v285, 0
  %v1097 = vsel %vm90, %v286, 0
  %v1100 = vsel %vm90, %v287, 0
  %v1103 = vsel %vm90, %v288, 0
  %v1106 = vsel %vm90, %v289, 0
  %v1109 = vsel %vm90, %v290, 0
  %v1112 = vsel %vm90, %v291, 0
  %v1115 = vsel %vm90, %v292, 0
  %v1118 = vsel %vm90, %v293, 0
  %v1121 = vsel %vm90, %v294, 0
  %v1124 = vsel %vm90, %v295, 0
  %v1127 = vsel %vm90, %v296, 0
  %v1130 = vsel %vm90, %v297, 0
  %v1133 = vsel %vm90, %v298, 0
  %v1136 = vsel %vm90, %v299, 0
  %v1139 = vsel %vm90, %v300, 0
  %v1142 = vsel %vm560, %v301, 0
  %1144 = vmatprep.subr.mxu0 0.0
  %1145 = vmatpush1.msra.mxu0 %v1142
  %1146 = vmatprep.subr.mxu0 0.0
  %1147 = vmatpush1.msra.mxu0 0.0
  %1148 = vmatprep.subr.mxu0 0.0
  %1149 = vmatpush1.msra.mxu0 0.0
  %1150 = vmatprep.subr.mxu0 0.0
  %1151 = vmatpush1.msra.mxu0 0.0
  %1152 = vmatprep.subr.mxu0 0.0
  %1153 = vmatpush1.msra.mxu0 0.0
  %1154 = vmatprep.subr.mxu0 0.0
  %1155 = vmatpush1.msra.mxu0 0.0
  %1156 = vmatprep.subr.mxu0 0.0
  %1157 = vmatpush1.msra.mxu0 0.0
  %1158 = vmatprep.subr.mxu0 0.0
  %1159 = vmatpush1.msra.mxu0 0.0
  %1160 = vmatprep.subr.mxu0 0.0
  %1161 = vmatpush1.msra.mxu0 0.0
  %1162 = vmatprep.subr.mxu0 0.0
  %1163 = vmatpush1.msra.mxu0 0.0
  %1164 = vmatprep.subr.mxu0 0.0
  %1165 = vmatpush1.msra.mxu0 0.0
  %1166 = vmatprep.subr.mxu0 0.0
  %1167 = vmatpush1.msra.mxu0 0.0
  %1168 = vmatprep.subr.mxu0 0.0
  %1169 = vmatpush1.msra.mxu0 0.0
  %1170 = vmatprep.subr.mxu0 0.0
  %1171 = vmatpush1.msra.mxu0 0.0
  %1172 = vmatprep.subr.mxu0 0.0
  %1173 = vmatpush1.msra.mxu0 0.0
  %1174 = vmatprep.subr.mxu0 0.0
  %1175 = vmatpush1.msra.mxu0 0.0
  %1176 = vmatprep.subr.mxu0 0.0
  %1177 = vmatpush1.msra.mxu0 0.0
  %1178 = vmatprep.subr.mxu0 0.0
  %1179 = vmatpush1.msra.mxu0 0.0
  %1180 = vmatprep.subr.mxu0 0.0
  %1181 = vmatpush1.msra.mxu0 0.0
  %1182 = vmatprep.subr.mxu0 0.0
  %1183 = vmatpush1.msra.mxu0 0.0
  %1184 = vmatprep.subr.mxu0 0.0
  %1185 = vmatpush1.msra.mxu0 0.0
  %1186 = vmatprep.subr.mxu0 0.0
  %1187 = vmatpush1.msra.mxu0 0.0
  %1188 = vmatprep.subr.mxu0 0.0
  %1189 = vmatpush1.msra.mxu0 0.0
  %1190 = vmatprep.subr.mxu0 0.0
  %1191 = vmatpush1.msra.mxu0 0.0
  %1192 = vmatprep.subr.mxu0 0.0
  %1193 = vmatpush1.msra.mxu0 0.0
  %1194 = vmatprep.subr.mxu0 0.0
  %1195 = vmatpush1.msra.mxu0 0.0
  %1196 = vmatprep.subr.mxu0 0.0
  %1197 = vmatpush1.msra.mxu0 0.0
  %1198 = vmatprep.subr.mxu0 0.0
  %1199 = vmatpush1.msra.mxu0 0.0
  %1200 = vmatprep.subr.mxu0 0.0
  %1201 = vmatpush1.msra.mxu0 0.0
  %1202 = vmatprep.subr.mxu0 0.0
  %1203 = vmatpush1.msra.mxu0 0.0
  %1204 = vmatprep.subr.mxu0 0.0
  %1205 = vmatpush1.msra.mxu0 0.0
  %1206 = vmatprep.subr.mxu0 0.0
  %1207 = vmatpush1.msra.mxu0 0.0
  %1208 = vmatprep.mubr.f32.mxu0 0.0
  %1209 = vmatmul.mubr.f32.gmra.mrb[0].mxu0 %v950
  %v1210 = vpop.f32.mrb[0].mxu0
  %v1211 = vadd.f32 %v631, %v1210
  %v1212 = vpop.f32.mrb[0].mxu0
  %1213 = vmatprep.mubr.f32.mxu0 0.0
  %1214 = vmatmul.mubr.f32.gmra.mrb[0].mxu0 %v953
  %v1215 = vpop.f32.mrb[0].mxu0
  %v1216 = vadd.f32 %v636, %v1215
  %v1217 = vpop.f32.mrb[0].mxu0
  %1218 = vmatprep.mubr.f32.mxu0 0.0
  %1219 = vmatmul.mubr.f32.gmra.mrb[0].mxu0 %v956
  %v1220 = vpop.f32.mrb[0].mxu0
  %v1221 = vadd.f32 %v641, %v1220
  %v1222 = vpop.f32.mrb[0].mxu0
  %1223 = vmatprep.mubr.f32.mxu0 0.0
  %1224 = vmatmul.mubr.f32.gmra.mrb[0].mxu0 %v959
  %v1225 = vpop.f32.mrb[0].mxu0
  %v1226 = vadd.f32 %v646, %v1225
  %v1227 = vpop.f32.mrb[0].mxu0
  %1228 = vmatprep.mubr.f32.mxu0 0.0
  %1229 = vmatmul.mubr.f32.gmra.mrb[0].mxu0 %v962
  %v1230 = vpop.f32.mrb[0].mxu0
  %v1231 = vadd.f32 %v651, %v1230
  %v1232 = vpop.f32.mrb[0].mxu0
  %1233 = vmatprep.mubr.f32.mxu0 0.0
  %1234 = vmatmul.mubr.f32.gmra.mrb[0].mxu0 %v965
  %v1235 = vpop.f32.mrb[0].mxu0
  %v1236 = vadd.f32 %v656, %v1235
  %v1237 = vpop.f32.mrb[0].mxu0
  %1238 = vmatprep.mubr.f32.mxu0 0.0
  %1239 = vmatmul.mubr.f32.gmra.mrb[0].mxu0 %v968
  %v1240 = vpop.f32.mrb[0].mxu0
  %v1241 = vadd.f32 %v661, %v1240
  %v1242 = vpop.f32.mrb[0].mxu0
  %1243 = vmatprep.mubr.f32.mxu0 0.0
  %1244 = vmatmul.mubr.f32.gmra.mrb[0].mxu0 %v971
  %v1245 = vpop.f32.mrb[0].mxu0
  %v1246 = vadd.f32 %v666, %v1245
  %v1247 = vpop.f32.mrb[0].mxu0
  %1248 = vmatprep.mubr.f32.mxu0 0.0
  %1249 = vmatmul.mubr.f32.gmra.mrb[0].mxu0 %v974
  %v1250 = vpop.f32.mrb[0].mxu0
  %v1251 = vadd.f32 %v671, %v1250
  %v1252 = vpop.f32.mrb[0].mxu0
  %1253 = vmatprep.mubr.f32.mxu0 0.0
  %1254 = vmatmul.mubr.f32.gmra.mrb[0].mxu0 %v977
  %v1255 = vpop.f32.mrb[0].mxu0
  %v1256 = vadd.f32 %v676, %v1255
  %v1257 = vpop.f32.mrb[0].mxu0
  %1258 = vmatprep.mubr.f32.mxu0 0.0
  %1259 = vmatmul.mubr.f32.gmra.mrb[0].mxu0 %v980
  %v1260 = vpop.f32.mrb[0].mxu0
  %v1261 = vadd.f32 %v681, %v1260
  %v1262 = vpop.f32.mrb[0].mxu0
  %1263 = vmatprep.mubr.f32.mxu0 0.0
  %1264 = vmatmul.mubr.f32.gmra.mrb[0].mxu0 %v983
  %v1265 = vpop.f32.mrb[0].mxu0
  %v1266 = vadd.f32 %v686, %v1265
  %v1267 = vpop.f32.mrb[0].mxu0
  %1268 = vmatprep.mubr.f32.mxu0 0.0
  %1269 = vmatmul.mubr.f32.gmra.mrb[0].mxu0 %v986
  %v1270 = vpop.f32.mrb[0].mxu0
  %v1271 = vadd.f32 %v691, %v1270
  %v1272 = vpop.f32.mrb[0].mxu0
  %1273 = vmatprep.mubr.f32.mxu0 0.0
  %1274 = vmatmul.mubr.f32.gmra.mrb[0].mxu0 %v989
  %v1275 = vpop.f32.mrb[0].mxu0
  %v1276 = vadd.f32 %v696, %v1275
  %v1277 = vpop.f32.mrb[0].mxu0
  %1278 = vmatprep.mubr.f32.mxu0 0.0
  %1279 = vmatmul.mubr.f32.gmra.mrb[0].mxu0 %v992
  %v1280 = vpop.f32.mrb[0].mxu0
  %v1281 = vadd.f32 %v701, %v1280
  %v1282 = vpop.f32.mrb[0].mxu0
  %1283 = vmatprep.mubr.f32.mxu0 0.0
  %1284 = vmatmul.mubr.f32.gmra.mrb[0].mxu0 %v995
  %v1285 = vpop.f32.mrb[0].mxu0
  %v1286 = vadd.f32 %v706, %v1285
  %v1287 = vpop.f32.mrb[0].mxu0
  %1288 = vmatprep.mubr.f32.mxu0 0.0
  %1289 = vmatmul.mubr.f32.gmra.mrb[0].mxu0 %v998
  %v1290 = vpop.f32.mrb[0].mxu0
  %v1291 = vadd.f32 %v711, %v1290
  %v1292 = vpop.f32.mrb[0].mxu0
  %1293 = vmatprep.mubr.f32.mxu0 0.0
  %1294 = vmatmul.mubr.f32.gmra.mrb[0].mxu0 %v1001
  %v1295 = vpop.f32.mrb[0].mxu0
  %v1296 = vadd.f32 %v716, %v1295
  %v1297 = vpop.f32.mrb[0].mxu0
  %1298 = vmatprep.mubr.f32.mxu0 0.0
  %1299 = vmatmul.mubr.f32.gmra.mrb[0].mxu0 %v1004
  %v1300 = vpop.f32.mrb[0].mxu0
  %v1301 = vadd.f32 %v721, %v1300
  %v1302 = vpop.f32.mrb[0].mxu0
  %1303 = vmatprep.mubr.f32.mxu0 0.0
  %1304 = vmatmul.mubr.f32.gmra.mrb[0].mxu0 %v1007
  %v1305 = vpop.f32.mrb[0].mxu0
  %v1306 = vadd.f32 %v726, %v1305
  %v1307 = vpop.f32.mrb[0].mxu0
  %1308 = vmatprep.mubr.f32.mxu0 0.0
  %1309 = vmatmul.mubr.f32.gmra.mrb[0].mxu0 %v1010
  %v1310 = vpop.f32.mrb[0].mxu0
  %v1311 = vadd.f32 %v731, %v1310
  %v1312 = vpop.f32.mrb[0].mxu0
  %1313 = vmatprep.mubr.f32.mxu0 0.0
  %1314 = vmatmul.mubr.f32.gmra.mrb[0].mxu0 %v1013
  %v1315 = vpop.f32.mrb[0].mxu0
  %v1316 = vadd.f32 %v736, %v1315
  %v1317 = vpop.f32.mrb[0].mxu0
  %1318 = vmatprep.mubr.f32.mxu0 0.0
  %1319 = vmatmul.mubr.f32.gmra.mrb[0].mxu0 %v1016
  %v1320 = vpop.f32.mrb[0].mxu0
  %v1321 = vadd.f32 %v741, %v1320
  %v1322 = vpop.f32.mrb[0].mxu0
  %1323 = vmatprep.mubr.f32.mxu0 0.0
  %1324 = vmatmul.mubr.f32.gmra.mrb[0].mxu0 %v1019
  %v1325 = vpop.f32.mrb[0].mxu0
  %v1326 = vadd.f32 %v746, %v1325
  %v1327 = vpop.f32.mrb[0].mxu0
  %1328 = vmatprep.mubr.f32.mxu0 0.0
  %1329 = vmatmul.mubr.f32.gmra.mrb[0].mxu0 %v1022
  %v1330 = vpop.f32.mrb[0].mxu0
  %v1331 = vadd.f32 %v751, %v1330
  %v1332 = vpop.f32.mrb[0].mxu0
  %1333 = vmatprep.mubr.f32.mxu0 0.0
  %1334 = vmatmul.mubr.f32.gmra.mrb[0].mxu0 %v1025
  %v1335 = vpop.f32.mrb[0].mxu0
  %v1336 = vadd.f32 %v756, %v1335
  %v1337 = vpop.f32.mrb[0].mxu0
  %1338 = vmatprep.mubr.f32.mxu0 0.0
  %1339 = vmatmul.mubr.f32.gmra.mrb[0].mxu0 %v1028
  %v1340 = vpop.f32.mrb[0].mxu0
  %v1341 = vadd.f32 %v761, %v1340
  %v1342 = vpop.f32.mrb[0].mxu0
  %1343 = vmatprep.mubr.f32.mxu0 0.0
  %1344 = vmatmul.mubr.f32.gmra.mrb[0].mxu0 %v1031
  %v1345 = vpop.f32.mrb[0].mxu0
  %v1346 = vadd.f32 %v766, %v1345
  %v1347 = vpop.f32.mrb[0].mxu0
  %1348 = vmatprep.mubr.f32.mxu0 0.0
  %1349 = vmatmul.mubr.f32.gmra.mrb[0].mxu0 %v1034
  %v1350 = vpop.f32.mrb[0].mxu0
  %v1351 = vadd.f32 %v771, %v1350
  %v1352 = vpop.f32.mrb[0].mxu0
  %1353 = vmatprep.mubr.f32.mxu0 0.0
  %1354 = vmatmul.mubr.f32.gmra.mrb[0].mxu0 %v1037
  %v1355 = vpop.f32.mrb[0].mxu0
  %v1356 = vadd.f32 %v776, %v1355
  %v1357 = vpop.f32.mrb[0].mxu0
  %1358 = vmatprep.mubr.f32.mxu0 0.0
  %1359 = vmatmul.mubr.f32.gmra.mrb[0].mxu0 %v1040
  %v1360 = vpop.f32.mrb[0].mxu0
  %v1361 = vadd.f32 %v781, %v1360
  %v1362 = vpop.f32.mrb[0].mxu0
  %1363 = vmatprep.mubr.f32.mxu0 0.0
  %1364 = vmatmul.mubr.f32.gmra.mrb[0].mxu0 %v1043
  %v1365 = vpop.f32.mrb[0].mxu0
  %v1366 = vadd.f32 %v786, %v1365
  %v1367 = vpop.f32.mrb[0].mxu0
  %1368 = vmatprep.mubr.f32.mxu0 0.0
  %1369 = vmatmul.mubr.f32.gmra.mrb[0].mxu0 %v1046
  %v1370 = vpop.f32.mrb[0].mxu0
  %v1371 = vadd.f32 %v791, %v1370
  %v1372 = vpop.f32.mrb[0].mxu0
  %1373 = vmatprep.mubr.f32.mxu0 0.0
  %1374 = vmatmul.mubr.f32.gmra.mrb[0].mxu0 %v1049
  %v1375 = vpop.f32.mrb[0].mxu0
  %v1376 = vadd.f32 %v796, %v1375
  %v1377 = vpop.f32.mrb[0].mxu0
  %1378 = vmatprep.mubr.f32.mxu0 0.0
  %1379 = vmatmul.mubr.f32.gmra.mrb[0].mxu0 %v1052
  %v1380 = vpop.f32.mrb[0].mxu0
  %v1381 = vadd.f32 %v801, %v1380
  %v1382 = vpop.f32.mrb[0].mxu0
  %1383 = vmatprep.mubr.f32.mxu0 0.0
  %1384 = vmatmul.mubr.f32.gmra.mrb[0].mxu0 %v1055
  %v1385 = vpop.f32.mrb[0].mxu0
  %v1386 = vadd.f32 %v806, %v1385
  %v1387 = vpop.f32.mrb[0].mxu0
  %1388 = vmatprep.mubr.f32.mxu0 0.0
  %1389 = vmatmul.mubr.f32.gmra.mrb[0].mxu0 %v1058
  %v1390 = vpop.f32.mrb[0].mxu0
  %v1391 = vadd.f32 %v811, %v1390
  %v1392 = vpop.f32.mrb[0].mxu0
  %1393 = vmatprep.mubr.f32.mxu0 0.0
  %1394 = vmatmul.mubr.f32.gmra.mrb[0].mxu0 %v1061
  %v1395 = vpop.f32.mrb[0].mxu0
  %v1396 = vadd.f32 %v816, %v1395
  %v1397 = vpop.f32.mrb[0].mxu0
  %1398 = vmatprep.mubr.f32.mxu0 0.0
  %1399 = vmatmul.mubr.f32.gmra.mrb[0].mxu0 %v1064
  %v1400 = vpop.f32.mrb[0].mxu0
  %v1401 = vadd.f32 %v821, %v1400
  %v1402 = vpop.f32.mrb[0].mxu0
  %1403 = vmatprep.mubr.f32.mxu0 0.0
  %1404 = vmatmul.mubr.f32.gmra.mrb[0].mxu0 %v1067
  %v1405 = vpop.f32.mrb[0].mxu0
  %v1406 = vadd.f32 %v826, %v1405
  %v1407 = vpop.f32.mrb[0].mxu0
  %1408 = vmatprep.mubr.f32.mxu0 0.0
  %1409 = vmatmul.mubr.f32.gmra.mrb[0].mxu0 %v1070
  %v1410 = vpop.f32.mrb[0].mxu0
  %v1411 = vadd.f32 %v831, %v1410
  %v1412 = vpop.f32.mrb[0].mxu0
  %1413 = vmatprep.mubr.f32.mxu0 0.0
  %1414 = vmatmul.mubr.f32.gmra.mrb[0].mxu0 %v1073
  %v1415 = vpop.f32.mrb[0].mxu0
  %v1416 = vadd.f32 %v836, %v1415
  %v1417 = vpop.f32.mrb[0].mxu0
  %1418 = vmatprep.mubr.f32.mxu0 0.0
  %1419 = vmatmul.mubr.f32.gmra.mrb[0].mxu0 %v1076
  %v1420 = vpop.f32.mrb[0].mxu0
  %v1421 = vadd.f32 %v841, %v1420
  %v1422 = vpop.f32.mrb[0].mxu0
  %1423 = vmatprep.mubr.f32.mxu0 0.0
  %1424 = vmatmul.mubr.f32.gmra.mrb[0].mxu0 %v1079
  %v1425 = vpop.f32.mrb[0].mxu0
  %v1426 = vadd.f32 %v846, %v1425
  %v1427 = vpop.f32.mrb[0].mxu0
  %1428 = vmatprep.mubr.f32.mxu0 0.0
  %1429 = vmatmul.mubr.f32.gmra.mrb[0].mxu0 %v1082
  %v1430 = vpop.f32.mrb[0].mxu0
  %v1431 = vadd.f32 %v851, %v1430
  %v1432 = vpop.f32.mrb[0].mxu0
  %1433 = vmatprep.mubr.f32.mxu0 0.0
  %1434 = vmatmul.mubr.f32.gmra.mrb[0].mxu0 %v1085
  %v1435 = vpop.f32.mrb[0].mxu0
  %v1436 = vadd.f32 %v856, %v1435
  %v1437 = vpop.f32.mrb[0].mxu0
  %1438 = vmatprep.mubr.f32.mxu0 0.0
  %1439 = vmatmul.mubr.f32.gmra.mrb[0].mxu0 %v1088
  %v1440 = vpop.f32.mrb[0].mxu0
  %v1441 = vadd.f32 %v861, %v1440
  %v1442 = vpop.f32.mrb[0].mxu0
  %1443 = vmatprep.mubr.f32.mxu0 0.0
  %1444 = vmatmul.mubr.f32.gmra.mrb[0].mxu0 %v1091
  %v1445 = vpop.f32.mrb[0].mxu0
  %v1446 = vadd.f32 %v866, %v1445
  %v1447 = vpop.f32.mrb[0].mxu0
  %1448 = vmatprep.mubr.f32.mxu0 0.0
  %1449 = vmatmul.mubr.f32.gmra.mrb[0].mxu0 %v1094
  %v1450 = vpop.f32.mrb[0].mxu0
  %v1451 = vadd.f32 %v871, %v1450
  %v1452 = vpop.f32.mrb[0].mxu0
  %1453 = vmatprep.mubr.f32.mxu0 0.0
  %1454 = vmatmul.mubr.f32.gmra.mrb[0].mxu0 %v1097
  %v1455 = vpop.f32.mrb[0].mxu0
  %v1456 = vadd.f32 %v876, %v1455
  %v1457 = vpop.f32.mrb[0].mxu0
  %1458 = vmatprep.mubr.f32.mxu0 0.0
  %1459 = vmatmul.mubr.f32.gmra.mrb[0].mxu0 %v1100
  %v1460 = vpop.f32.mrb[0].mxu0
  %v1461 = vadd.f32 %v881, %v1460
  %v1462 = vpop.f32.mrb[0].mxu0
  %1463 = vmatprep.mubr.f32.mxu0 0.0
  %1464 = vmatmul.mubr.f32.gmra.mrb[0].mxu0 %v1103
  %v1465 = vpop.f32.mrb[0].mxu0
  %v1466 = vadd.f32 %v886, %v1465
  %v1467 = vpop.f32.mrb[0].mxu0
  %1468 = vmatprep.mubr.f32.mxu0 0.0
  %1469 = vmatmul.mubr.f32.gmra.mrb[0].mxu0 %v1106
  %v1470 = vpop.f32.mrb[0].mxu0
  %v1471 = vadd.f32 %v891, %v1470
  %v1472 = vpop.f32.mrb[0].mxu0
  %1473 = vmatprep.mubr.f32.mxu0 0.0
  %1474 = vmatmul.mubr.f32.gmra.mrb[0].mxu0 %v1109
  %v1475 = vpop.f32.mrb[0].mxu0
  %v1476 = vadd.f32 %v896, %v1475
  %v1477 = vpop.f32.mrb[0].mxu0
  %1478 = vmatprep.mubr.f32.mxu0 0.0
  %1479 = vmatmul.mubr.f32.gmra.mrb[0].mxu0 %v1112
  %v1480 = vpop.f32.mrb[0].mxu0
  %v1481 = vadd.f32 %v901, %v1480
  %v1482 = vpop.f32.mrb[0].mxu0
  %1483 = vmatprep.mubr.f32.mxu0 0.0
  %1484 = vmatmul.mubr.f32.gmra.mrb[0].mxu0 %v1115
  %v1485 = vpop.f32.mrb[0].mxu0
  %v1486 = vadd.f32 %v906, %v1485
  %v1487 = vpop.f32.mrb[0].mxu0
  %1488 = vmatprep.mubr.f32.mxu0 0.0
  %1489 = vmatmul.mubr.f32.gmra.mrb[0].mxu0 %v1118
  %v1490 = vpop.f32.mrb[0].mxu0
  %v1491 = vadd.f32 %v911, %v1490
  %v1492 = vpop.f32.mrb[0].mxu0
  %1493 = vmatprep.mubr.f32.mxu0 0.0
  %1494 = vmatmul.mubr.f32.gmra.mrb[0].mxu0 %v1121
  %v1495 = vpop.f32.mrb[0].mxu0
  %v1496 = vadd.f32 %v916, %v1495
  %v1497 = vpop.f32.mrb[0].mxu0
  %1498 = vmatprep.mubr.f32.mxu0 0.0
  %1499 = vmatmul.mubr.f32.gmra.mrb[0].mxu0 %v1124
  %v1500 = vpop.f32.mrb[0].mxu0
  %v1501 = vadd.f32 %v921, %v1500
  %v1502 = vpop.f32.mrb[0].mxu0
  %1503 = vmatprep.mubr.f32.mxu0 0.0
  %1504 = vmatmul.mubr.f32.gmra.mrb[0].mxu0 %v1127
  %v1505 = vpop.f32.mrb[0].mxu0
  %v1506 = vadd.f32 %v926, %v1505
  %v1507 = vpop.f32.mrb[0].mxu0
  %1508 = vmatprep.mubr.f32.mxu0 0.0
  %1509 = vmatmul.mubr.f32.gmra.mrb[0].mxu0 %v1130
  %v1510 = vpop.f32.mrb[0].mxu0
  %v1511 = vadd.f32 %v931, %v1510
  %v1512 = vpop.f32.mrb[0].mxu0
  %1513 = vmatprep.mubr.f32.mxu0 0.0
  %1514 = vmatmul.mubr.f32.gmra.mrb[0].mxu0 %v1133
  %v1515 = vpop.f32.mrb[0].mxu0
  %v1516 = vadd.f32 %v936, %v1515
  %v1517 = vpop.f32.mrb[0].mxu0
  %1518 = vmatprep.mubr.f32.mxu0 0.0
  %1519 = vmatmul.mubr.f32.gmra.mrb[0].mxu0 %v1136
  %v1520 = vpop.f32.mrb[0].mxu0
  %v1521 = vadd.f32 %v941, %v1520
  %v1522 = vpop.f32.mrb[0].mxu0
  %1523 = vmatprep.mubr.f32.mxu0 0.0
  %1524 = vmatmul.mubr.f32.gmra.mrb[0].mxu0 %v1139
  %v1525 = vpop.f32.mrb[0].mxu0
  %v1526 = vadd.f32 %v946, %v1525
  %v1527 = vpop.f32.mrb[0].mxu0
  %1528 = vdwg.mxu0
  %v1529 = vld [vmem:[#allocation2 + $0x2] sm:$0xff]
  %v1530 = vld [vmem:[#allocation2 + $0xa] sm:$0xff]
  %v1531 = vld [vmem:[#allocation2 + $0x1a] sm:$0xff]
  %v1532 = vld [vmem:[#allocation2 + $0x22] sm:$0xff]
  %v1533 = vld [vmem:[#allocation2 + $0x32] sm:$0xff]
  %v1534 = vld [vmem:[#allocation2 + $0x3a] sm:$0xff]
  %v1535 = vld [vmem:[#allocation2 + $0x4a] sm:$0xff]
  %v1536 = vld [vmem:[#allocation2 + $0x52] sm:$0xff]
  %v1537 = vld [vmem:[#allocation2 + $0x62] sm:$0xff]
  %v1538 = vld [vmem:[#allocation2 + $0x6a] sm:$0xff]
  %v1539 = vld [vmem:[#allocation2 + $0x7a] sm:$0xff]
  %v1540 = vld [vmem:[#allocation2 + $0x82] sm:$0xff]
  %v1541 = vld [vmem:[#allocation2 + $0x92] sm:$0xff]
  %v1542 = vld [vmem:[#allocation2 + $0x9a] sm:$0xff]
  %v1543 = vld [vmem:[#allocation2 + $0xaa] sm:$0xff]
  %v1544 = vld [vmem:[#allocation2 + $0xb2] sm:$0xff]
  %v1545 = vld [vmem:[#allocation2 + $0xc2] sm:$0xff]
  %v1546 = vld [vmem:[#allocation2 + $0xca] sm:$0xff]
  %v1547 = vld [vmem:[#allocation2 + $0xda] sm:$0xff]
  %v1548 = vld [vmem:[#allocation2 + $0xe2] sm:$0xff]
  %v1549 = vld [vmem:[#allocation2 + $0xf2] sm:$0xff]
  %v1550 = vld [vmem:[#allocation2 + $0xfa] sm:$0xff]
  %v1551 = vld [vmem:[#allocation2 + $0x10a] sm:$0xff]
  %v1552 = vld [vmem:[#allocation2 + $0x112] sm:$0xff]
  %v1553 = vld [vmem:[#allocation2 + $0x122] sm:$0xff]
  %v1554 = vld [vmem:[#allocation2 + $0x12a] sm:$0xff]
  %v1555 = vld [vmem:[#allocation2 + $0x13a] sm:$0xff]
  %v1556 = vld [vmem:[#allocation2 + $0x142] sm:$0xff]
  %v1557 = vld [vmem:[#allocation2 + $0x152] sm:$0xff]
  %v1558 = vld [vmem:[#allocation2 + $0x15a] sm:$0xff]
  %v1559 = vld [vmem:[#allocation2 + $0x16a] sm:$0xff]
  %v1560 = vld [vmem:[#allocation2 + $0x172] sm:$0xff]
  %v1561 = vld [vmem:[#allocation2 + $0x1b2] sm:$0xff]
  %v1562 = vld [vmem:[#allocation2 + $0x1ba] sm:$0xff]
  %v1563 = vld [vmem:[#allocation2 + $0x1ca] sm:$0xff]
  %v1564 = vld [vmem:[#allocation2 + $0x1d2] sm:$0xff]
  %v1565 = vld [vmem:[#allocation2 + $0x1e2] sm:$0xff]
  %v1566 = vld [vmem:[#allocation2 + $0x1ea] sm:$0xff]
  %v1567 = vld [vmem:[#allocation2 + $0x1fa] sm:$0xff]
  %v1568 = vld [vmem:[#allocation2 + $0x202] sm:$0xff]
  %v1569 = vld [vmem:[#allocation2 + $0x212] sm:$0xff]
  %v1570 = vld [vmem:[#allocation2 + $0x21a] sm:$0xff]
  %v1571 = vld [vmem:[#allocation2 + $0x22a] sm:$0xff]
  %v1572 = vld [vmem:[#allocation2 + $0x232] sm:$0xff]
  %v1573 = vld [vmem:[#allocation2 + $0x242] sm:$0xff]
  %v1574 = vld [vmem:[#allocation2 + $0x24a] sm:$0xff]
  %v1575 = vld [vmem:[#allocation2 + $0x25a] sm:$0xff]
  %v1576 = vld [vmem:[#allocation2 + $0x262] sm:$0xff]
  %v1577 = vld [vmem:[#allocation2 + $0x272] sm:$0xff]
  %v1578 = vld [vmem:[#allocation2 + $0x27a] sm:$0xff]
  %v1579 = vld [vmem:[#allocation2 + $0x28a] sm:$0xff]
  %v1580 = vld [vmem:[#allocation2 + $0x292] sm:$0xff]
  %v1581 = vld [vmem:[#allocation2 + $0x2a2] sm:$0xff]
  %v1582 = vld [vmem:[#allocation2 + $0x2aa] sm:$0xff]
  %v1583 = vld [vmem:[#allocation2 + $0x2ba] sm:$0xff]
  %v1584 = vld [vmem:[#allocation2 + $0x2c2] sm:$0xff]
  %v1585 = vld [vmem:[#allocation2 + $0x2d2] sm:$0xff]
  %v1586 = vld [vmem:[#allocation2 + $0x2da] sm:$0xff]
  %v1587 = vld [vmem:[#allocation2 + $0x2ea] sm:$0xff]
  %v1588 = vld [vmem:[#allocation2 + $0x2f2] sm:$0xff]
  %v1589 = vld [vmem:[#allocation2 + $0x302] sm:$0xff]
  %v1590 = vld [vmem:[#allocation2 + $0x30a] sm:$0xff]
  %v1591 = vld [vmem:[#allocation2 + $0x31a] sm:$0xff]
  %v1592 = vld [vmem:[#allocation2 + $0x322] sm:$0xff]
  %s1593 = scalar_lea.vmem %s1, 8
  %v1594 = vld [vmem:[%s1593] sm:$0xf]
  %v1596 = vsel %vm90, %v1529, 0
  %v1599 = vsel %vm90, %v1530, 0
  %v1602 = vsel %vm90, %v1531, 0
  %v1605 = vsel %vm90, %v1532, 0
  %v1608 = vsel %vm90, %v1533, 0
  %v1611 = vsel %vm90, %v1534, 0
  %v1614 = vsel %vm90, %v1535, 0
  %v1617 = vsel %vm90, %v1536, 0
  %v1620 = vsel %vm90, %v1537, 0
  %v1623 = vsel %vm90, %v1538, 0
  %v1626 = vsel %vm90, %v1539, 0
  %v1629 = vsel %vm90, %v1540, 0
  %v1632 = vsel %vm90, %v1541, 0
  %v1635 = vsel %vm90, %v1542, 0
  %v1638 = vsel %vm90, %v1543, 0
  %v1641 = vsel %vm90, %v1544, 0
  %v1644 = vsel %vm90, %v1545, 0
  %v1647 = vsel %vm90, %v1546, 0
  %v1650 = vsel %vm90, %v1547, 0
  %v1653 = vsel %vm90, %v1548, 0
  %v1656 = vsel %vm90, %v1549, 0
  %v1659 = vsel %vm90, %v1550, 0
  %v1662 = vsel %vm90, %v1551, 0
  %v1665 = vsel %vm90, %v1552, 0
  %v1668 = vsel %vm90, %v1553, 0
  %v1671 = vsel %vm90, %v1554, 0
  %v1674 = vsel %vm90, %v1555, 0
  %v1677 = vsel %vm90, %v1556, 0
  %v1680 = vsel %vm90, %v1557, 0
  %v1683 = vsel %vm90, %v1558, 0
  %v1686 = vsel %vm90, %v1559, 0
  %v1689 = vsel %vm90, %v1560, 0
  %v1692 = vsel %vm90, %v1561, 0
  %v1695 = vsel %vm90, %v1562, 0
  %v1698 = vsel %vm90, %v1563, 0
  %v1701 = vsel %vm90, %v1564, 0
  %v1704 = vsel %vm90, %v1565, 0
  %v1707 = vsel %vm90, %v1566, 0
  %v1710 = vsel %vm90, %v1567, 0
  %v1713 = vsel %vm90, %v1568, 0
  %v1716 = vsel %vm90, %v1569, 0
  %v1719 = vsel %vm90, %v1570, 0
  %v1722 = vsel %vm90, %v1571, 0
  %v1725 = vsel %vm90, %v1572, 0
  %v1728 = vsel %vm90, %v1573, 0
  %v1731 = vsel %vm90, %v1574, 0
  %v1734 = vsel %vm90, %v1575, 0
  %v1737 = vsel %vm90, %v1576, 0
  %v1740 = vsel %vm90, %v1577, 0
  %v1743 = vsel %vm90, %v1578, 0
  %v1746 = vsel %vm90, %v1579, 0
  %v1749 = vsel %vm90, %v1580, 0
  %v1752 = vsel %vm90, %v1581, 0
  %v1755 = vsel %vm90, %v1582, 0
  %v1758 = vsel %vm90, %v1583, 0
  %v1761 = vsel %vm90, %v1584, 0
  %v1764 = vsel %vm90, %v1585, 0
  %v1767 = vsel %vm90, %v1586, 0
  %v1770 = vsel %vm90, %v1587, 0
  %v1773 = vsel %vm90, %v1588, 0
  %v1776 = vsel %vm90, %v1589, 0
  %v1779 = vsel %vm90, %v1590, 0
  %v1782 = vsel %vm90, %v1591, 0
  %v1785 = vsel %vm90, %v1592, 0
  %v1788 = vsel %vm560, %v1594, 0
  %1790 = vmatprep.subr.mxu0 0.0
  %1791 = vmatpush1.msra.mxu0 %v1788
  %1792 = vmatprep.subr.mxu0 0.0
  %1793 = vmatpush1.msra.mxu0 0.0
  %1794 = vmatprep.subr.mxu0 0.0
  %1795 = vmatpush1.msra.mxu0 0.0
  %1796 = vmatprep.subr.mxu0 0.0
  %1797 = vmatpush1.msra.mxu0 0.0
  %1798 = vmatprep.subr.mxu0 0.0
  %1799 = vmatpush1.msra.mxu0 0.0
  %1800 = vmatprep.subr.mxu0 0.0
  %1801 = vmatpush1.msra.mxu0 0.0
  %1802 = vmatprep.subr.mxu0 0.0
  %1803 = vmatpush1.msra.mxu0 0.0
  %1804 = vmatprep.subr.mxu0 0.0
  %1805 = vmatpush1.msra.mxu0 0.0
  %1806 = vmatprep.subr.mxu0 0.0
  %1807 = vmatpush1.msra.mxu0 0.0
  %1808 = vmatprep.subr.mxu0 0.0
  %1809 = vmatpush1.msra.mxu0 0.0
  %1810 = vmatprep.subr.mxu0 0.0
  %1811 = vmatpush1.msra.mxu0 0.0
  %1812 = vmatprep.subr.mxu0 0.0
  %1813 = vmatpush1.msra.mxu0 0.0
  %1814 = vmatprep.subr.mxu0 0.0
  %1815 = vmatpush1.msra.mxu0 0.0
  %1816 = vmatprep.subr.mxu0 0.0
  %1817 = vmatpush1.msra.mxu0 0.0
  %1818 = vmatprep.subr.mxu0 0.0
  %1819 = vmatpush1.msra.mxu0 0.0
  %1820 = vmatprep.subr.mxu0 0.0
  %1821 = vmatpush1.msra.mxu0 0.0
  %1822 = vmatprep.subr.mxu0 0.0
  %1823 = vmatpush1.msra.mxu0 0.0
  %1824 = vmatprep.subr.mxu0 0.0
  %1825 = vmatpush1.msra.mxu0 0.0
  %1826 = vmatprep.subr.mxu0 0.0
  %1827 = vmatpush1.msra.mxu0 0.0
  %1828 = vmatprep.subr.mxu0 0.0
  %1829 = vmatpush1.msra.mxu0 0.0
  %1830 = vmatprep.subr.mxu0 0.0
  %1831 = vmatpush1.msra.mxu0 0.0
  %1832 = vmatprep.subr.mxu0 0.0
  %1833 = vmatpush1.msra.mxu0 0.0
  %1834 = vmatprep.subr.mxu0 0.0
  %1835 = vmatpush1.msra.mxu0 0.0
  %1836 = vmatprep.subr.mxu0 0.0
  %1837 = vmatpush1.msra.mxu0 0.0
  %1838 = vmatprep.subr.mxu0 0.0
  %1839 = vmatpush1.msra.mxu0 0.0
  %1840 = vmatprep.subr.mxu0 0.0
  %1841 = vmatpush1.msra.mxu0 0.0
  %1842 = vmatprep.subr.mxu0 0.0
  %1843 = vmatpush1.msra.mxu0 0.0
  %1844 = vmatprep.subr.mxu0 0.0
  %1845 = vmatpush1.msra.mxu0 0.0
  %1846 = vmatprep.subr.mxu0 0.0
  %1847 = vmatpush1.msra.mxu0 0.0
  %1848 = vmatprep.subr.mxu0 0.0
  %1849 = vmatpush1.msra.mxu0 0.0
  %1850 = vmatprep.subr.mxu0 0.0
  %1851 = vmatpush1.msra.mxu0 0.0
  %1852 = vmatprep.subr.mxu0 0.0
  %1853 = vmatpush1.msra.mxu0 0.0
  %1854 = vmatprep.mubr.f32.mxu0 0.0
  %1855 = vmatmul.mubr.f32.gmra.mrb[0].mxu0 %v1596
  %v1856 = vpop.f32.mrb[0].mxu0
  %v1857 = vadd.f32 0.0, %v1856
  %v1858 = vpop.f32.mrb[0].mxu0
  %1859 = vmatprep.mubr.f32.mxu0 0.0
  %1860 = vmatmul.mubr.f32.gmra.mrb[0].mxu0 %v1599
  %v1861 = vpop.f32.mrb[0].mxu0
  %v1862 = vadd.f32 0.0, %v1861
  %v1863 = vpop.f32.mrb[0].mxu0
  %1864 = vmatprep.mubr.f32.mxu0 0.0
  %1865 = vmatmul.mubr.f32.gmra.mrb[0].mxu0 %v1602
  %v1866 = vpop.f32.mrb[0].mxu0
  %v1867 = vadd.f32 0.0, %v1866
  %v1868 = vpop.f32.mrb[0].mxu0
  %1869 = vmatprep.mubr.f32.mxu0 0.0
  %1870 = vmatmul.mubr.f32.gmra.mrb[0].mxu0 %v1605
  %v1871 = vpop.f32.mrb[0].mxu0
  %v1872 = vadd.f32 0.0, %v1871
  %v1873 = vpop.f32.mrb[0].mxu0
  %1874 = vmatprep.mubr.f32.mxu0 0.0
  %1875 = vmatmul.mubr.f32.gmra.mrb[0].mxu0 %v1608
  %v1876 = vpop.f32.mrb[0].mxu0
  %v1877 = vadd.f32 0.0, %v1876
  %v1878 = vpop.f32.mrb[0].mxu0
  %1879 = vmatprep.mubr.f32.mxu0 0.0
  %1880 = vmatmul.mubr.f32.gmra.mrb[0].mxu0 %v1611
  %v1881 = vpop.f32.mrb[0].mxu0
  %v1882 = vadd.f32 0.0, %v1881
  %v1883 = vpop.f32.mrb[0].mxu0
  %1884 = vmatprep.mubr.f32.mxu0 0.0
  %1885 = vmatmul.mubr.f32.gmra.mrb[0].mxu0 %v1614
  %v1886 = vpop.f32.mrb[0].mxu0
  %v1887 = vadd.f32 0.0, %v1886
  %v1888 = vpop.f32.mrb[0].mxu0
  %1889 = vmatprep.mubr.f32.mxu0 0.0
  %1890 = vmatmul.mubr.f32.gmra.mrb[0].mxu0 %v1617
  %v1891 = vpop.f32.mrb[0].mxu0
  %v1892 = vadd.f32 0.0, %v1891
  %v1893 = vpop.f32.mrb[0].mxu0
  %1894 = vmatprep.mubr.f32.mxu0 0.0
  %1895 = vmatmul.mubr.f32.gmra.mrb[0].mxu0 %v1620
  %v1896 = vpop.f32.mrb[0].mxu0
  %v1897 = vadd.f32 0.0, %v1896
  %v1898 = vpop.f32.mrb[0].mxu0
  %1899 = vmatprep.mubr.f32.mxu0 0.0
  %1900 = vmatmul.mubr.f32.gmra.mrb[0].mxu0 %v1623
  %v1901 = vpop.f32.mrb[0].mxu0
  %v1902 = vadd.f32 0.0, %v1901
  %v1903 = vpop.f32.mrb[0].mxu0
  %1904 = vmatprep.mubr.f32.mxu0 0.0
  %1905 = vmatmul.mubr.f32.gmra.mrb[0].mxu0 %v1626
  %v1906 = vpop.f32.mrb[0].mxu0
  %v1907 = vadd.f32 0.0, %v1906
  %v1908 = vpop.f32.mrb[0].mxu0
  %1909 = vmatprep.mubr.f32.mxu0 0.0
  %1910 = vmatmul.mubr.f32.gmra.mrb[0].mxu0 %v1629
  %v1911 = vpop.f32.mrb[0].mxu0
  %v1912 = vadd.f32 0.0, %v1911
  %v1913 = vpop.f32.mrb[0].mxu0
  %1914 = vmatprep.mubr.f32.mxu0 0.0
  %1915 = vmatmul.mubr.f32.gmra.mrb[0].mxu0 %v1632
  %v1916 = vpop.f32.mrb[0].mxu0
  %v1917 = vadd.f32 0.0, %v1916
  %v1918 = vpop.f32.mrb[0].mxu0
  %1919 = vmatprep.mubr.f32.mxu0 0.0
  %1920 = vmatmul.mubr.f32.gmra.mrb[0].mxu0 %v1635
  %v1921 = vpop.f32.mrb[0].mxu0
  %v1922 = vadd.f32 0.0, %v1921
  %v1923 = vpop.f32.mrb[0].mxu0
  %1924 = vmatprep.mubr.f32.mxu0 0.0
  %1925 = vmatmul.mubr.f32.gmra.mrb[0].mxu0 %v1638
  %v1926 = vpop.f32.mrb[0].mxu0
  %v1927 = vadd.f32 0.0, %v1926
  %v1928 = vpop.f32.mrb[0].mxu0
  %1929 = vmatprep.mubr.f32.mxu0 0.0
  %1930 = vmatmul.mubr.f32.gmra.mrb[0].mxu0 %v1641
  %v1931 = vpop.f32.mrb[0].mxu0
  %v1932 = vadd.f32 0.0, %v1931
  %v1933 = vpop.f32.mrb[0].mxu0
  %1934 = vmatprep.mubr.f32.mxu0 0.0
  %1935 = vmatmul.mubr.f32.gmra.mrb[0].mxu0 %v1644
  %v1936 = vpop.f32.mrb[0].mxu0
  %v1937 = vadd.f32 0.0, %v1936
  %v1938 = vpop.f32.mrb[0].mxu0
  %1939 = vmatprep.mubr.f32.mxu0 0.0
  %1940 = vmatmul.mubr.f32.gmra.mrb[0].mxu0 %v1647
  %v1941 = vpop.f32.mrb[0].mxu0
  %v1942 = vadd.f32 0.0, %v1941
  %v1943 = vpop.f32.mrb[0].mxu0
  %1944 = vmatprep.mubr.f32.mxu0 0.0
  %1945 = vmatmul.mubr.f32.gmra.mrb[0].mxu0 %v1650
  %v1946 = vpop.f32.mrb[0].mxu0
  %v1947 = vadd.f32 0.0, %v1946
  %v1948 = vpop.f32.mrb[0].mxu0
  %1949 = vmatprep.mubr.f32.mxu0 0.0
  %1950 = vmatmul.mubr.f32.gmra.mrb[0].mxu0 %v1653
  %v1951 = vpop.f32.mrb[0].mxu0
  %v1952 = vadd.f32 0.0, %v1951
  %v1953 = vpop.f32.mrb[0].mxu0
  %1954 = vmatprep.mubr.f32.mxu0 0.0
  %1955 = vmatmul.mubr.f32.gmra.mrb[0].mxu0 %v1656
  %v1956 = vpop.f32.mrb[0].mxu0
  %v1957 = vadd.f32 0.0, %v1956
  %v1958 = vpop.f32.mrb[0].mxu0
  %1959 = vmatprep.mubr.f32.mxu0 0.0
  %1960 = vmatmul.mubr.f32.gmra.mrb[0].mxu0 %v1659
  %v1961 = vpop.f32.mrb[0].mxu0
  %v1962 = vadd.f32 0.0, %v1961
  %v1963 = vpop.f32.mrb[0].mxu0
  %1964 = vmatprep.mubr.f32.mxu0 0.0
  %1965 = vmatmul.mubr.f32.gmra.mrb[0].mxu0 %v1662
  %v1966 = vpop.f32.mrb[0].mxu0
  %v1967 = vadd.f32 0.0, %v1966
  %v1968 = vpop.f32.mrb[0].mxu0
  %1969 = vmatprep.mubr.f32.mxu0 0.0
  %1970 = vmatmul.mubr.f32.gmra.mrb[0].mxu0 %v1665
  %v1971 = vpop.f32.mrb[0].mxu0
  %v1972 = vadd.f32 0.0, %v1971
  %v1973 = vpop.f32.mrb[0].mxu0
  %1974 = vmatprep.mubr.f32.mxu0 0.0
  %1975 = vmatmul.mubr.f32.gmra.mrb[0].mxu0 %v1668
  %v1976 = vpop.f32.mrb[0].mxu0
  %v1977 = vadd.f32 0.0, %v1976
  %v1978 = vpop.f32.mrb[0].mxu0
  %1979 = vmatprep.mubr.f32.mxu0 0.0
  %1980 = vmatmul.mubr.f32.gmra.mrb[0].mxu0 %v1671
  %v1981 = vpop.f32.mrb[0].mxu0
  %v1982 = vadd.f32 0.0, %v1981
  %v1983 = vpop.f32.mrb[0].mxu0
  %1984 = vmatprep.mubr.f32.mxu0 0.0
  %1985 = vmatmul.mubr.f32.gmra.mrb[0].mxu0 %v1674
  %v1986 = vpop.f32.mrb[0].mxu0
  %v1987 = vadd.f32 0.0, %v1986
  %v1988 = vpop.f32.mrb[0].mxu0
  %1989 = vmatprep.mubr.f32.mxu0 0.0
  %1990 = vmatmul.mubr.f32.gmra.mrb[0].mxu0 %v1677
  %v1991 = vpop.f32.mrb[0].mxu0
  %v1992 = vadd.f32 0.0, %v1991
  %v1993 = vpop.f32.mrb[0].mxu0
  %1994 = vmatprep.mubr.f32.mxu0 0.0
  %1995 = vmatmul.mubr.f32.gmra.mrb[0].mxu0 %v1680
  %v1996 = vpop.f32.mrb[0].mxu0
  %v1997 = vadd.f32 0.0, %v1996
  %v1998 = vpop.f32.mrb[0].mxu0
  %1999 = vmatprep.mubr.f32.mxu0 0.0
  %2000 = vmatmul.mubr.f32.gmra.mrb[0].mxu0 %v1683
  %v2001 = vpop.f32.mrb[0].mxu0
  %v2002 = vadd.f32 0.0, %v2001
  %v2003 = vpop.f32.mrb[0].mxu0
  %2004 = vmatprep.mubr.f32.mxu0 0.0
  %2005 = vmatmul.mubr.f32.gmra.mrb[0].mxu0 %v1686
  %v2006 = vpop.f32.mrb[0].mxu0
  %v2007 = vadd.f32 0.0, %v2006
  %v2008 = vpop.f32.mrb[0].mxu0
  %2009 = vmatprep.mubr.f32.mxu0 0.0
  %2010 = vmatmul.mubr.f32.gmra.mrb[0].mxu0 %v1689
  %v2011 = vpop.f32.mrb[0].mxu0
  %v2012 = vadd.f32 0.0, %v2011
  %v2013 = vpop.f32.mrb[0].mxu0
  %2014 = vmatprep.mubr.f32.mxu0 0.0
  %2015 = vmatmul.mubr.f32.gmra.mrb[0].mxu0 %v1692
  %v2016 = vpop.f32.mrb[0].mxu0
  %v2017 = vadd.f32 0.0, %v2016
  %v2018 = vpop.f32.mrb[0].mxu0
  %2019 = vmatprep.mubr.f32.mxu0 0.0
  %2020 = vmatmul.mubr.f32.gmra.mrb[0].mxu0 %v1695
  %v2021 = vpop.f32.mrb[0].mxu0
  %v2022 = vadd.f32 0.0, %v2021
  %v2023 = vpop.f32.mrb[0].mxu0
  %2024 = vmatprep.mubr.f32.mxu0 0.0
  %2025 = vmatmul.mubr.f32.gmra.mrb[0].mxu0 %v1698
  %v2026 = vpop.f32.mrb[0].mxu0
  %v2027 = vadd.f32 0.0, %v2026
  %v2028 = vpop.f32.mrb[0].mxu0
  %2029 = vmatprep.mubr.f32.mxu0 0.0
  %2030 = vmatmul.mubr.f32.gmra.mrb[0].mxu0 %v1701
  %v2031 = vpop.f32.mrb[0].mxu0
  %v2032 = vadd.f32 0.0, %v2031
  %v2033 = vpop.f32.mrb[0].mxu0
  %2034 = vmatprep.mubr.f32.mxu0 0.0
  %2035 = vmatmul.mubr.f32.gmra.mrb[0].mxu0 %v1704
  %v2036 = vpop.f32.mrb[0].mxu0
  %v2037 = vadd.f32 0.0, %v2036
  %v2038 = vpop.f32.mrb[0].mxu0
  %2039 = vmatprep.mubr.f32.mxu0 0.0
  %2040 = vmatmul.mubr.f32.gmra.mrb[0].mxu0 %v1707
  %v2041 = vpop.f32.mrb[0].mxu0
  %v2042 = vadd.f32 0.0, %v2041
  %v2043 = vpop.f32.mrb[0].mxu0
  %2044 = vmatprep.mubr.f32.mxu0 0.0
  %2045 = vmatmul.mubr.f32.gmra.mrb[0].mxu0 %v1710
  %v2046 = vpop.f32.mrb[0].mxu0
  %v2047 = vadd.f32 0.0, %v2046
  %v2048 = vpop.f32.mrb[0].mxu0
  %2049 = vmatprep.mubr.f32.mxu0 0.0
  %2050 = vmatmul.mubr.f32.gmra.mrb[0].mxu0 %v1713
  %v2051 = vpop.f32.mrb[0].mxu0
  %v2052 = vadd.f32 0.0, %v2051
  %v2053 = vpop.f32.mrb[0].mxu0
  %2054 = vmatprep.mubr.f32.mxu0 0.0
  %2055 = vmatmul.mubr.f32.gmra.mrb[0].mxu0 %v1716
  %v2056 = vpop.f32.mrb[0].mxu0
  %v2057 = vadd.f32 0.0, %v2056
  %v2058 = vpop.f32.mrb[0].mxu0
  %2059 = vmatprep.mubr.f32.mxu0 0.0
  %2060 = vmatmul.mubr.f32.gmra.mrb[0].mxu0 %v1719
  %v2061 = vpop.f32.mrb[0].mxu0
  %v2062 = vadd.f32 0.0, %v2061
  %v2063 = vpop.f32.mrb[0].mxu0
  %2064 = vmatprep.mubr.f32.mxu0 0.0
  %2065 = vmatmul.mubr.f32.gmra.mrb[0].mxu0 %v1722
  %v2066 = vpop.f32.mrb[0].mxu0
  %v2067 = vadd.f32 0.0, %v2066
  %v2068 = vpop.f32.mrb[0].mxu0
  %2069 = vmatprep.mubr.f32.mxu0 0.0
  %2070 = vmatmul.mubr.f32.gmra.mrb[0].mxu0 %v1725
  %v2071 = vpop.f32.mrb[0].mxu0
  %v2072 = vadd.f32 0.0, %v2071
  %v2073 = vpop.f32.mrb[0].mxu0
  %2074 = vmatprep.mubr.f32.mxu0 0.0
  %2075 = vmatmul.mubr.f32.gmra.mrb[0].mxu0 %v1728
  %v2076 = vpop.f32.mrb[0].mxu0
  %v2077 = vadd.f32 0.0, %v2076
  %v2078 = vpop.f32.mrb[0].mxu0
  %2079 = vmatprep.mubr.f32.mxu0 0.0
  %2080 = vmatmul.mubr.f32.gmra.mrb[0].mxu0 %v1731
  %v2081 = vpop.f32.mrb[0].mxu0
  %v2082 = vadd.f32 0.0, %v2081
  %v2083 = vpop.f32.mrb[0].mxu0
  %2084 = vmatprep.mubr.f32.mxu0 0.0
  %2085 = vmatmul.mubr.f32.gmra.mrb[0].mxu0 %v1734
  %v2086 = vpop.f32.mrb[0].mxu0
  %v2087 = vadd.f32 0.0, %v2086
  %v2088 = vpop.f32.mrb[0].mxu0
  %2089 = vmatprep.mubr.f32.mxu0 0.0
  %2090 = vmatmul.mubr.f32.gmra.mrb[0].mxu0 %v1737
  %v2091 = vpop.f32.mrb[0].mxu0
  %v2092 = vadd.f32 0.0, %v2091
  %v2093 = vpop.f32.mrb[0].mxu0
  %2094 = vmatprep.mubr.f32.mxu0 0.0
  %2095 = vmatmul.mubr.f32.gmra.mrb[0].mxu0 %v1740
  %v2096 = vpop.f32.mrb[0].mxu0
  %v2097 = vadd.f32 0.0, %v2096
  %v2098 = vpop.f32.mrb[0].mxu0
  %2099 = vmatprep.mubr.f32.mxu0 0.0
  %2100 = vmatmul.mubr.f32.gmra.mrb[0].mxu0 %v1743
  %v2101 = vpop.f32.mrb[0].mxu0
  %v2102 = vadd.f32 0.0, %v2101
  %v2103 = vpop.f32.mrb[0].mxu0
  %2104 = vmatprep.mubr.f32.mxu0 0.0
  %2105 = vmatmul.mubr.f32.gmra.mrb[0].mxu0 %v1746
  %v2106 = vpop.f32.mrb[0].mxu0
  %v2107 = vadd.f32 0.0, %v2106
  %v2108 = vpop.f32.mrb[0].mxu0
  %2109 = vmatprep.mubr.f32.mxu0 0.0
  %2110 = vmatmul.mubr.f32.gmra.mrb[0].mxu0 %v1749
  %v2111 = vpop.f32.mrb[0].mxu0
  %v2112 = vadd.f32 0.0, %v2111
  %v2113 = vpop.f32.mrb[0].mxu0
  %2114 = vmatprep.mubr.f32.mxu0 0.0
  %2115 = vmatmul.mubr.f32.gmra.mrb[0].mxu0 %v1752
  %v2116 = vpop.f32.mrb[0].mxu0
  %v2117 = vadd.f32 0.0, %v2116
  %v2118 = vpop.f32.mrb[0].mxu0
  %2119 = vmatprep.mubr.f32.mxu0 0.0
  %2120 = vmatmul.mubr.f32.gmra.mrb[0].mxu0 %v1755
  %v2121 = vpop.f32.mrb[0].mxu0
  %v2122 = vadd.f32 0.0, %v2121
  %v2123 = vpop.f32.mrb[0].mxu0
  %2124 = vmatprep.mubr.f32.mxu0 0.0
  %2125 = vmatmul.mubr.f32.gmra.mrb[0].mxu0 %v1758
  %v2126 = vpop.f32.mrb[0].mxu0
  %v2127 = vadd.f32 0.0, %v2126
  %v2128 = vpop.f32.mrb[0].mxu0
  %2129 = vmatprep.mubr.f32.mxu0 0.0
  %2130 = vmatmul.mubr.f32.gmra.mrb[0].mxu0 %v1761
  %v2131 = vpop.f32.mrb[0].mxu0
  %v2132 = vadd.f32 0.0, %v2131
  %v2133 = vpop.f32.mrb[0].mxu0
  %2134 = vmatprep.mubr.f32.mxu0 0.0
  %2135 = vmatmul.mubr.f32.gmra.mrb[0].mxu0 %v1764
  %v2136 = vpop.f32.mrb[0].mxu0
  %v2137 = vadd.f32 0.0, %v2136
  %v2138 = vpop.f32.mrb[0].mxu0
  %2139 = vmatprep.mubr.f32.mxu0 0.0
  %2140 = vmatmul.mubr.f32.gmra.mrb[0].mxu0 %v1767
  %v2141 = vpop.f32.mrb[0].mxu0
  %v2142 = vadd.f32 0.0, %v2141
  %v2143 = vpop.f32.mrb[0].mxu0
  %2144 = vmatprep.mubr.f32.mxu0 0.0
  %2145 = vmatmul.mubr.f32.gmra.mrb[0].mxu0 %v1770
  %v2146 = vpop.f32.mrb[0].mxu0
  %v2147 = vadd.f32 0.0, %v2146
  %v2148 = vpop.f32.mrb[0].mxu0
  %2149 = vmatprep.mubr.f32.mxu0 0.0
  %2150 = vmatmul.mubr.f32.gmra.mrb[0].mxu0 %v1773
  %v2151 = vpop.f32.mrb[0].mxu0
  %v2152 = vadd.f32 0.0, %v2151
  %v2153 = vpop.f32.mrb[0].mxu0
  %2154 = vmatprep.mubr.f32.mxu0 0.0
  %2155 = vmatmul.mubr.f32.gmra.mrb[0].mxu0 %v1776
  %v2156 = vpop.f32.mrb[0].mxu0
  %v2157 = vadd.f32 0.0, %v2156
  %v2158 = vpop.f32.mrb[0].mxu0
  %2159 = vmatprep.mubr.f32.mxu0 0.0
  %2160 = vmatmul.mubr.f32.gmra.mrb[0].mxu0 %v1779
  %v2161 = vpop.f32.mrb[0].mxu0
  %v2162 = vadd.f32 0.0, %v2161
  %v2163 = vpop.f32.mrb[0].mxu0
  %2164 = vmatprep.mubr.f32.mxu0 0.0
  %2165 = vmatmul.mubr.f32.gmra.mrb[0].mxu0 %v1782
  %v2166 = vpop.f32.mrb[0].mxu0
  %v2167 = vadd.f32 0.0, %v2166
  %v2168 = vpop.f32.mrb[0].mxu0
  %2169 = vmatprep.mubr.f32.mxu0 0.0
  %2170 = vmatmul.mubr.f32.gmra.mrb[0].mxu0 %v1785
  %v2171 = vpop.f32.mrb[0].mxu0
  %v2172 = vadd.f32 0.0, %v2171
  %v2173 = vpop.f32.mrb[0].mxu0
  %2174 = vdwg.mxu0
  %v2175 = vadd.f32 %v1211, %v1857
  %v2176 = vadd.f32 %v1216, %v1862
  %v2177 = vadd.f32 %v1221, %v1867
  %v2178 = vadd.f32 %v1226, %v1872
  %v2179 = vadd.f32 %v1231, %v1877
  %v2180 = vadd.f32 %v1236, %v1882
  %v2181 = vadd.f32 %v1241, %v1887
  %v2182 = vadd.f32 %v1246, %v1892
  %v2183 = vadd.f32 %v1251, %v1897
  %v2184 = vadd.f32 %v1256, %v1902
  %v2185 = vadd.f32 %v1261, %v1907
  %v2186 = vadd.f32 %v1266, %v1912
  %v2187 = vadd.f32 %v1271, %v1917
  %v2188 = vadd.f32 %v1276, %v1922
  %v2189 = vadd.f32 %v1281, %v1927
  %v2190 = vadd.f32 %v1286, %v1932
  %v2191 = vadd.f32 %v1291, %v1937
  %v2192 = vadd.f32 %v1296, %v1942
  %v2193 = vadd.f32 %v1301, %v1947
  %v2194 = vadd.f32 %v1306, %v1952
  %v2195 = vadd.f32 %v1311, %v1957
  %v2196 = vadd.f32 %v1316, %v1962
  %v2197 = vadd.f32 %v1321, %v1967
  %v2198 = vadd.f32 %v1326, %v1972
  %v2199 = vadd.f32 %v1331, %v1977
  %v2200 = vadd.f32 %v1336, %v1982
  %v2201 = vadd.f32 %v1341, %v1987
  %v2202 = vadd.f32 %v1346, %v1992
  %v2203 = vadd.f32 %v1351, %v1997
  %v2204 = vadd.f32 %v1356, %v2002
  %v2205 = vadd.f32 %v1361, %v2007
  %v2206 = vadd.f32 %v1366, %v2012
  %v2207 = vadd.f32 %v1371, %v2017
  %v2208 = vadd.f32 %v1376, %v2022
  %v2209 = vadd.f32 %v1381, %v2027
  %v2210 = vadd.f32 %v1386, %v2032
  %v2211 = vadd.f32 %v1391, %v2037
  %v2212 = vadd.f32 %v1396, %v2042
  %v2213 = vadd.f32 %v1401, %v2047
  %v2214 = vadd.f32 %v1406, %v2052
  %v2215 = vadd.f32 %v1411, %v2057
  %v2216 = vadd.f32 %v1416, %v2062
  %v2217 = vadd.f32 %v1421, %v2067
  %v2218 = vadd.f32 %v1426, %v2072
  %v2219 = vadd.f32 %v1431, %v2077
  %v2220 = vadd.f32 %v1436, %v2082
  %v2221 = vadd.f32 %v1441, %v2087
  %v2222 = vadd.f32 %v1446, %v2092
  %v2223 = vadd.f32 %v1451, %v2097
  %v2224 = vadd.f32 %v1456, %v2102
  %v2225 = vadd.f32 %v1461, %v2107
  %v2226 = vadd.f32 %v1466, %v2112
  %v2227 = vadd.f32 %v1471, %v2117
  %v2228 = vadd.f32 %v1476, %v2122
  %v2229 = vadd.f32 %v1481, %v2127
  %v2230 = vadd.f32 %v1486, %v2132
  %v2231 = vadd.f32 %v1491, %v2137
  %v2232 = vadd.f32 %v1496, %v2142
  %v2233 = vadd.f32 %v1501, %v2147
  %v2234 = vadd.f32 %v1506, %v2152
  %v2235 = vadd.f32 %v1511, %v2157
  %v2236 = vadd.f32 %v1516, %v2162
  %v2237 = vadd.f32 %v1521, %v2167
  %v2238 = vadd.f32 %v1526, %v2172
  %v2239 = vld [vmem:[%s105] sm:$0xff]
  %v2240 = vld [vmem:[%s105 + $0x8] sm:$0xff]
  %v2241 = vld [vmem:[%s105 + $0x18] sm:$0xff]
  %v2242 = vld [vmem:[%s105 + $0x20] sm:$0xff]
  %v2243 = vld [vmem:[%s105 + $0x30] sm:$0xff]
  %v2244 = vld [vmem:[%s105 + $0x38] sm:$0xff]
  %v2245 = vld [vmem:[%s105 + $0x48] sm:$0xff]
  %v2246 = vld [vmem:[%s105 + $0x50] sm:$0xff]
  %v2247 = vld [vmem:[%s105 + $0x60] sm:$0xff]
  %v2248 = vld [vmem:[%s105 + $0x68] sm:$0xff]
  %v2249 = vld [vmem:[%s105 + $0x78] sm:$0xff]
  %v2250 = vld [vmem:[%s105 + $0x80] sm:$0xff]
  %v2251 = vld [vmem:[%s105 + $0x90] sm:$0xff]
  %v2252 = vld [vmem:[%s105 + $0x98] sm:$0xff]
  %v2253 = vld [vmem:[%s105 + $0xa8] sm:$0xff]
  %v2254 = vld [vmem:[%s105 + $0xb0] sm:$0xff]
  %v2255 = vld [vmem:[%s105 + $0xc0] sm:$0xff]
  %v2256 = vld [vmem:[%s105 + $0xc8] sm:$0xff]
  %v2257 = vld [vmem:[%s105 + $0xd8] sm:$0xff]
  %v2258 = vld [vmem:[%s105 + $0xe0] sm:$0xff]
  %v2259 = vld [vmem:[%s105 + $0xf0] sm:$0xff]
  %v2260 = vld [vmem:[%s105 + $0xf8] sm:$0xff]
  %v2261 = vld [vmem:[%s105 + $0x108] sm:$0xff]
  %v2262 = vld [vmem:[%s105 + $0x110] sm:$0xff]
  %v2263 = vld [vmem:[%s105 + $0x120] sm:$0xff]
  %v2264 = vld [vmem:[%s105 + $0x128] sm:$0xff]
  %v2265 = vld [vmem:[%s105 + $0x138] sm:$0xff]
  %v2266 = vld [vmem:[%s105 + $0x140] sm:$0xff]
  %v2267 = vld [vmem:[%s105 + $0x150] sm:$0xff]
  %v2268 = vld [vmem:[%s105 + $0x158] sm:$0xff]
  %v2269 = vld [vmem:[%s105 + $0x168] sm:$0xff]
  %v2270 = vld [vmem:[%s105 + $0x170] sm:$0xff]
  %v2271 = vld [vmem:[%s105 + $0x1b0] sm:$0xff]
  %v2272 = vld [vmem:[%s105 + $0x1b8] sm:$0xff]
  %v2273 = vld [vmem:[%s105 + $0x1c8] sm:$0xff]
  %v2274 = vld [vmem:[%s105 + $0x1d0] sm:$0xff]
  %v2275 = vld [vmem:[%s105 + $0x1e0] sm:$0xff]
  %v2276 = vld [vmem:[%s105 + $0x1e8] sm:$0xff]
  %v2277 = vld [vmem:[%s105 + $0x1f8] sm:$0xff]
  %v2278 = vld [vmem:[%s105 + $0x200] sm:$0xff]
  %v2279 = vld [vmem:[%s105 + $0x210] sm:$0xff]
  %v2280 = vld [vmem:[%s105 + $0x218] sm:$0xff]
  %v2281 = vld [vmem:[%s105 + $0x228] sm:$0xff]
  %v2282 = vld [vmem:[%s105 + $0x230] sm:$0xff]
  %v2283 = vld [vmem:[%s105 + $0x240] sm:$0xff]
  %v2284 = vld [vmem:[%s105 + $0x248] sm:$0xff]
  %v2285 = vld [vmem:[%s105 + $0x258] sm:$0xff]
  %v2286 = vld [vmem:[%s105 + $0x260] sm:$0xff]
  %v2287 = vld [vmem:[%s105 + $0x270] sm:$0xff]
  %v2288 = vld [vmem:[%s105 + $0x278] sm:$0xff]
  %v2289 = vld [vmem:[%s105 + $0x288] sm:$0xff]
  %v2290 = vld [vmem:[%s105 + $0x290] sm:$0xff]
  %v2291 = vld [vmem:[%s105 + $0x2a0] sm:$0xff]
  %v2292 = vld [vmem:[%s105 + $0x2a8] sm:$0xff]
  %v2293 = vld [vmem:[%s105 + $0x2b8] sm:$0xff]
  %v2294 = vld [vmem:[%s105 + $0x2c0] sm:$0xff]
  %v2295 = vld [vmem:[%s105 + $0x2d0] sm:$0xff]
  %v2296 = vld [vmem:[%s105 + $0x2d8] sm:$0xff]
  %v2297 = vld [vmem:[%s105 + $0x2e8] sm:$0xff]
  %v2298 = vld [vmem:[%s105 + $0x2f0] sm:$0xff]
  %v2299 = vld [vmem:[%s105 + $0x300] sm:$0xff]
  %v2300 = vld [vmem:[%s105 + $0x308] sm:$0xff]
  %v2301 = vld [vmem:[%s105 + $0x318] sm:$0xff]
  %v2302 = vld [vmem:[%s105 + $0x320] sm:$0xff]
  %s2303 = scalar_lea.vmem %s1, 12
  %v2304 = vld [vmem:[%s2303] sm:$0xf]
  %v2306 = vsel %vm90, %v2239, 0
  %v2309 = vsel %vm90, %v2240, 0
  %v2312 = vsel %vm90, %v2241, 0
  %v2315 = vsel %vm90, %v2242, 0
  %v2318 = vsel %vm90, %v2243, 0
  %v2321 = vsel %vm90, %v2244, 0
  %v2324 = vsel %vm90, %v2245, 0
  %v2327 = vsel %vm90, %v2246, 0
  %v2330 = vsel %vm90, %v2247, 0
  %v2333 = vsel %vm90, %v2248, 0
  %v2336 = vsel %vm90, %v2249, 0
  %v2339 = vsel %vm90, %v2250, 0
  %v2342 = vsel %vm90, %v2251, 0
  %v2345 = vsel %vm90, %v2252, 0
  %v2348 = vsel %vm90, %v2253, 0
  %v2351 = vsel %vm90, %v2254, 0
  %v2354 = vsel %vm90, %v2255, 0
  %v2357 = vsel %vm90, %v2256, 0
  %v2360 = vsel %vm90, %v2257, 0
  %v2363 = vsel %vm90, %v2258, 0
  %v2366 = vsel %vm90, %v2259, 0
  %v2369 = vsel %vm90, %v2260, 0
  %v2372 = vsel %vm90, %v2261, 0
  %v2375 = vsel %vm90, %v2262, 0
  %v2378 = vsel %vm90, %v2263, 0
  %v2381 = vsel %vm90, %v2264, 0
  %v2384 = vsel %vm90, %v2265, 0
  %v2387 = vsel %vm90, %v2266, 0
  %v2390 = vsel %vm90, %v2267, 0
  %v2393 = vsel %vm90, %v2268, 0
  %v2396 = vsel %vm90, %v2269, 0
  %v2399 = vsel %vm90, %v2270, 0
  %v2402 = vsel %vm90, %v2271, 0
  %v2405 = vsel %vm90, %v2272, 0
  %v2408 = vsel %vm90, %v2273, 0
  %v2411 = vsel %vm90, %v2274, 0
  %v2414 = vsel %vm90, %v2275, 0
  %v2417 = vsel %vm90, %v2276, 0
  %v2420 = vsel %vm90, %v2277, 0
  %v2423 = vsel %vm90, %v2278, 0
  %v2426 = vsel %vm90, %v2279, 0
  %v2429 = vsel %vm90, %v2280, 0
  %v2432 = vsel %vm90, %v2281, 0
  %v2435 = vsel %vm90, %v2282, 0
  %v2438 = vsel %vm90, %v2283, 0
  %v2441 = vsel %vm90, %v2284, 0
  %v2444 = vsel %vm90, %v2285, 0
  %v2447 = vsel %vm90, %v2286, 0
  %v2450 = vsel %vm90, %v2287, 0
  %v2453 = vsel %vm90, %v2288, 0
  %v2456 = vsel %vm90, %v2289, 0
  %v2459 = vsel %vm90, %v2290, 0
  %v2462 = vsel %vm90, %v2291, 0
  %v2465 = vsel %vm90, %v2292, 0
  %v2468 = vsel %vm90, %v2293, 0
  %v2471 = vsel %vm90, %v2294, 0
  %v2474 = vsel %vm90, %v2295, 0
  %v2477 = vsel %vm90, %v2296, 0
  %v2480 = vsel %vm90, %v2297, 0
  %v2483 = vsel %vm90, %v2298, 0
  %v2486 = vsel %vm90, %v2299, 0
  %v2489 = vsel %vm90, %v2300, 0
  %v2492 = vsel %vm90, %v2301, 0
  %v2495 = vsel %vm90, %v2302, 0
  %v2498 = vsel %vm560, %v2304, 0
  %2500 = vmatprep.subr.mxu0 0.0
  %2501 = vmatpush1.msra.mxu0 %v2498
  %2502 = vmatprep.subr.mxu0 0.0
  %2503 = vmatpush1.msra.mxu0 0.0
  %2504 = vmatprep.subr.mxu0 0.0
  %2505 = vmatpush1.msra.mxu0 0.0
  %2506 = vmatprep.subr.mxu0 0.0
  %2507 = vmatpush1.msra.mxu0 0.0
  %2508 = vmatprep.subr.mxu0 0.0
  %2509 = vmatpush1.msra.mxu0 0.0
  %2510 = vmatprep.subr.mxu0 0.0
  %2511 = vmatpush1.msra.mxu0 0.0
  %2512 = vmatprep.subr.mxu0 0.0
  %2513 = vmatpush1.msra.mxu0 0.0
  %2514 = vmatprep.subr.mxu0 0.0
  %2515 = vmatpush1.msra.mxu0 0.0
  %2516 = vmatprep.subr.mxu0 0.0
  %2517 = vmatpush1.msra.mxu0 0.0
  %2518 = vmatprep.subr.mxu0 0.0
  %2519 = vmatpush1.msra.mxu0 0.0
  %2520 = vmatprep.subr.mxu0 0.0
  %2521 = vmatpush1.msra.mxu0 0.0
  %2522 = vmatprep.subr.mxu0 0.0
  %2523 = vmatpush1.msra.mxu0 0.0
  %2524 = vmatprep.subr.mxu0 0.0
  %2525 = vmatpush1.msra.mxu0 0.0
  %2526 = vmatprep.subr.mxu0 0.0
  %2527 = vmatpush1.msra.mxu0 0.0
  %2528 = vmatprep.subr.mxu0 0.0
  %2529 = vmatpush1.msra.mxu0 0.0
  %2530 = vmatprep.subr.mxu0 0.0
  %2531 = vmatpush1.msra.mxu0 0.0
  %2532 = vmatprep.subr.mxu0 0.0
  %2533 = vmatpush1.msra.mxu0 0.0
  %2534 = vmatprep.subr.mxu0 0.0
  %2535 = vmatpush1.msra.mxu0 0.0
  %2536 = vmatprep.subr.mxu0 0.0
  %2537 = vmatpush1.msra.mxu0 0.0
  %2538 = vmatprep.subr.mxu0 0.0
  %2539 = vmatpush1.msra.mxu0 0.0
  %2540 = vmatprep.subr.mxu0 0.0
  %2541 = vmatpush1.msra.mxu0 0.0
  %2542 = vmatprep.subr.mxu0 0.0
  %2543 = vmatpush1.msra.mxu0 0.0
  %2544 = vmatprep.subr.mxu0 0.0
  %2545 = vmatpush1.msra.mxu0 0.0
  %2546 = vmatprep.subr.mxu0 0.0
  %2547 = vmatpush1.msra.mxu0 0.0
  %2548 = vmatprep.subr.mxu0 0.0
  %2549 = vmatpush1.msra.mxu0 0.0
  %2550 = vmatprep.subr.mxu0 0.0
  %2551 = vmatpush1.msra.mxu0 0.0
  %2552 = vmatprep.subr.mxu0 0.0
  %2553 = vmatpush1.msra.mxu0 0.0
  %2554 = vmatprep.subr.mxu0 0.0
  %2555 = vmatpush1.msra.mxu0 0.0
  %2556 = vmatprep.subr.mxu0 0.0
  %2557 = vmatpush1.msra.mxu0 0.0
  %2558 = vmatprep.subr.mxu0 0.0
  %2559 = vmatpush1.msra.mxu0 0.0
  %2560 = vmatprep.subr.mxu0 0.0
  %2561 = vmatpush1.msra.mxu0 0.0
  %2562 = vmatprep.subr.mxu0 0.0
  %2563 = vmatpush1.msra.mxu0 0.0
  %2564 = vmatprep.mubr.f32.mxu0 0.0
  %2565 = vmatmul.mubr.f32.gmra.mrb[0].mxu0 %v2306
  %v2566 = vpop.f32.mrb[0].mxu0
  %v2567 = vadd.f32 0.0, %v2566
  %v2568 = vpop.f32.mrb[0].mxu0
  %2569 = vmatprep.mubr.f32.mxu0 0.0
  %2570 = vmatmul.mubr.f32.gmra.mrb[0].mxu0 %v2309
  %v2571 = vpop.f32.mrb[0].mxu0
  %v2572 = vadd.f32 0.0, %v2571
  %v2573 = vpop.f32.mrb[0].mxu0
  %2574 = vmatprep.mubr.f32.mxu0 0.0
  %2575 = vmatmul.mubr.f32.gmra.mrb[0].mxu0 %v2312
  %v2576 = vpop.f32.mrb[0].mxu0
  %v2577 = vadd.f32 0.0, %v2576
  %v2578 = vpop.f32.mrb[0].mxu0
  %2579 = vmatprep.mubr.f32.mxu0 0.0
  %2580 = vmatmul.mubr.f32.gmra.mrb[0].mxu0 %v2315
  %v2581 = vpop.f32.mrb[0].mxu0
  %v2582 = vadd.f32 0.0, %v2581
  %v2583 = vpop.f32.mrb[0].mxu0
  %2584 = vmatprep.mubr.f32.mxu0 0.0
  %2585 = vmatmul.mubr.f32.gmra.mrb[0].mxu0 %v2318
  %v2586 = vpop.f32.mrb[0].mxu0
  %v2587 = vadd.f32 0.0, %v2586
  %v2588 = vpop.f32.mrb[0].mxu0
  %2589 = vmatprep.mubr.f32.mxu0 0.0
  %2590 = vmatmul.mubr.f32.gmra.mrb[0].mxu0 %v2321
  %v2591 = vpop.f32.mrb[0].mxu0
  %v2592 = vadd.f32 0.0, %v2591
  %v2593 = vpop.f32.mrb[0].mxu0
  %2594 = vmatprep.mubr.f32.mxu0 0.0
  %2595 = vmatmul.mubr.f32.gmra.mrb[0].mxu0 %v2324
  %v2596 = vpop.f32.mrb[0].mxu0
  %v2597 = vadd.f32 0.0, %v2596
  %v2598 = vpop.f32.mrb[0].mxu0
  %2599 = vmatprep.mubr.f32.mxu0 0.0
  %2600 = vmatmul.mubr.f32.gmra.mrb[0].mxu0 %v2327
  %v2601 = vpop.f32.mrb[0].mxu0
  %v2602 = vadd.f32 0.0, %v2601
  %v2603 = vpop.f32.mrb[0].mxu0
  %2604 = vmatprep.mubr.f32.mxu0 0.0
  %2605 = vmatmul.mubr.f32.gmra.mrb[0].mxu0 %v2330
  %v2606 = vpop.f32.mrb[0].mxu0
  %v2607 = vadd.f32 0.0, %v2606
  %v2608 = vpop.f32.mrb[0].mxu0
  %2609 = vmatprep.mubr.f32.mxu0 0.0
  %2610 = vmatmul.mubr.f32.gmra.mrb[0].mxu0 %v2333
  %v2611 = vpop.f32.mrb[0].mxu0
  %v2612 = vadd.f32 0.0, %v2611
  %v2613 = vpop.f32.mrb[0].mxu0
  %2614 = vmatprep.mubr.f32.mxu0 0.0
  %2615 = vmatmul.mubr.f32.gmra.mrb[0].mxu0 %v2336
  %v2616 = vpop.f32.mrb[0].mxu0
  %v2617 = vadd.f32 0.0, %v2616
  %v2618 = vpop.f32.mrb[0].mxu0
  %2619 = vmatprep.mubr.f32.mxu0 0.0
  %2620 = vmatmul.mubr.f32.gmra.mrb[0].mxu0 %v2339
  %v2621 = vpop.f32.mrb[0].mxu0
  %v2622 = vadd.f32 0.0, %v2621
  %v2623 = vpop.f32.mrb[0].mxu0
  %2624 = vmatprep.mubr.f32.mxu0 0.0
  %2625 = vmatmul.mubr.f32.gmra.mrb[0].mxu0 %v2342
  %v2626 = vpop.f32.mrb[0].mxu0
  %v2627 = vadd.f32 0.0, %v2626
  %v2628 = vpop.f32.mrb[0].mxu0
  %2629 = vmatprep.mubr.f32.mxu0 0.0
  %2630 = vmatmul.mubr.f32.gmra.mrb[0].mxu0 %v2345
  %v2631 = vpop.f32.mrb[0].mxu0
  %v2632 = vadd.f32 0.0, %v2631
  %v2633 = vpop.f32.mrb[0].mxu0
  %2634 = vmatprep.mubr.f32.mxu0 0.0
  %2635 = vmatmul.mubr.f32.gmra.mrb[0].mxu0 %v2348
  %v2636 = vpop.f32.mrb[0].mxu0
  %v2637 = vadd.f32 0.0, %v2636
  %v2638 = vpop.f32.mrb[0].mxu0
  %2639 = vmatprep.mubr.f32.mxu0 0.0
  %2640 = vmatmul.mubr.f32.gmra.mrb[0].mxu0 %v2351
  %v2641 = vpop.f32.mrb[0].mxu0
  %v2642 = vadd.f32 0.0, %v2641
  %v2643 = vpop.f32.mrb[0].mxu0
  %2644 = vmatprep.mubr.f32.mxu0 0.0
  %2645 = vmatmul.mubr.f32.gmra.mrb[0].mxu0 %v2354
  %v2646 = vpop.f32.mrb[0].mxu0
  %v2647 = vadd.f32 0.0, %v2646
  %v2648 = vpop.f32.mrb[0].mxu0
  %2649 = vmatprep.mubr.f32.mxu0 0.0
  %2650 = vmatmul.mubr.f32.gmra.mrb[0].mxu0 %v2357
  %v2651 = vpop.f32.mrb[0].mxu0
  %v2652 = vadd.f32 0.0, %v2651
  %v2653 = vpop.f32.mrb[0].mxu0
  %2654 = vmatprep.mubr.f32.mxu0 0.0
  %2655 = vmatmul.mubr.f32.gmra.mrb[0].mxu0 %v2360
  %v2656 = vpop.f32.mrb[0].mxu0
  %v2657 = vadd.f32 0.0, %v2656
  %v2658 = vpop.f32.mrb[0].mxu0
  %2659 = vmatprep.mubr.f32.mxu0 0.0
  %2660 = vmatmul.mubr.f32.gmra.mrb[0].mxu0 %v2363
  %v2661 = vpop.f32.mrb[0].mxu0
  %v2662 = vadd.f32 0.0, %v2661
  %v2663 = vpop.f32.mrb[0].mxu0
  %2664 = vmatprep.mubr.f32.mxu0 0.0
  %2665 = vmatmul.mubr.f32.gmra.mrb[0].mxu0 %v2366
  %v2666 = vpop.f32.mrb[0].mxu0
  %v2667 = vadd.f32 0.0, %v2666
  %v2668 = vpop.f32.mrb[0].mxu0
  %2669 = vmatprep.mubr.f32.mxu0 0.0
  %2670 = vmatmul.mubr.f32.gmra.mrb[0].mxu0 %v2369
  %v2671 = vpop.f32.mrb[0].mxu0
  %v2672 = vadd.f32 0.0, %v2671
  %v2673 = vpop.f32.mrb[0].mxu0
  %2674 = vmatprep.mubr.f32.mxu0 0.0
  %2675 = vmatmul.mubr.f32.gmra.mrb[0].mxu0 %v2372
  %v2676 = vpop.f32.mrb[0].mxu0
  %v2677 = vadd.f32 0.0, %v2676
  %v2678 = vpop.f32.mrb[0].mxu0
  %2679 = vmatprep.mubr.f32.mxu0 0.0
  %2680 = vmatmul.mubr.f32.gmra.mrb[0].mxu0 %v2375
  %v2681 = vpop.f32.mrb[0].mxu0
  %v2682 = vadd.f32 0.0, %v2681
  %v2683 = vpop.f32.mrb[0].mxu0
  %2684 = vmatprep.mubr.f32.mxu0 0.0
  %2685 = vmatmul.mubr.f32.gmra.mrb[0].mxu0 %v2378
  %v2686 = vpop.f32.mrb[0].mxu0
  %v2687 = vadd.f32 0.0, %v2686
  %v2688 = vpop.f32.mrb[0].mxu0
  %2689 = vmatprep.mubr.f32.mxu0 0.0
  %2690 = vmatmul.mubr.f32.gmra.mrb[0].mxu0 %v2381
  %v2691 = vpop.f32.mrb[0].mxu0
  %v2692 = vadd.f32 0.0, %v2691
  %v2693 = vpop.f32.mrb[0].mxu0
  %2694 = vmatprep.mubr.f32.mxu0 0.0
  %2695 = vmatmul.mubr.f32.gmra.mrb[0].mxu0 %v2384
  %v2696 = vpop.f32.mrb[0].mxu0
  %v2697 = vadd.f32 0.0, %v2696
  %v2698 = vpop.f32.mrb[0].mxu0
  %2699 = vmatprep.mubr.f32.mxu0 0.0
  %2700 = vmatmul.mubr.f32.gmra.mrb[0].mxu0 %v2387
  %v2701 = vpop.f32.mrb[0].mxu0
  %v2702 = vadd.f32 0.0, %v2701
  %v2703 = vpop.f32.mrb[0].mxu0
  %2704 = vmatprep.mubr.f32.mxu0 0.0
  %2705 = vmatmul.mubr.f32.gmra.mrb[0].mxu0 %v2390
  %v2706 = vpop.f32.mrb[0].mxu0
  %v2707 = vadd.f32 0.0, %v2706
  %v2708 = vpop.f32.mrb[0].mxu0
  %2709 = vmatprep.mubr.f32.mxu0 0.0
  %2710 = vmatmul.mubr.f32.gmra.mrb[0].mxu0 %v2393
  %v2711 = vpop.f32.mrb[0].mxu0
  %v2712 = vadd.f32 0.0, %v2711
  %v2713 = vpop.f32.mrb[0].mxu0
  %2714 = vmatprep.mubr.f32.mxu0 0.0
  %2715 = vmatmul.mubr.f32.gmra.mrb[0].mxu0 %v2396
  %v2716 = vpop.f32.mrb[0].mxu0
  %v2717 = vadd.f32 0.0, %v2716
  %v2718 = vpop.f32.mrb[0].mxu0
  %2719 = vmatprep.mubr.f32.mxu0 0.0
  %2720 = vmatmul.mubr.f32.gmra.mrb[0].mxu0 %v2399
  %v2721 = vpop.f32.mrb[0].mxu0
  %v2722 = vadd.f32 0.0, %v2721
  %v2723 = vpop.f32.mrb[0].mxu0
  %2724 = vmatprep.mubr.f32.mxu0 0.0
  %2725 = vmatmul.mubr.f32.gmra.mrb[0].mxu0 %v2402
  %v2726 = vpop.f32.mrb[0].mxu0
  %v2727 = vadd.f32 0.0, %v2726
  %v2728 = vpop.f32.mrb[0].mxu0
  %2729 = vmatprep.mubr.f32.mxu0 0.0
  %2730 = vmatmul.mubr.f32.gmra.mrb[0].mxu0 %v2405
  %v2731 = vpop.f32.mrb[0].mxu0
  %v2732 = vadd.f32 0.0, %v2731
  %v2733 = vpop.f32.mrb[0].mxu0
  %2734 = vmatprep.mubr.f32.mxu0 0.0
  %2735 = vmatmul.mubr.f32.gmra.mrb[0].mxu0 %v2408
  %v2736 = vpop.f32.mrb[0].mxu0
  %v2737 = vadd.f32 0.0, %v2736
  %v2738 = vpop.f32.mrb[0].mxu0
  %2739 = vmatprep.mubr.f32.mxu0 0.0
  %2740 = vmatmul.mubr.f32.gmra.mrb[0].mxu0 %v2411
  %v2741 = vpop.f32.mrb[0].mxu0
  %v2742 = vadd.f32 0.0, %v2741
  %v2743 = vpop.f32.mrb[0].mxu0
  %2744 = vmatprep.mubr.f32.mxu0 0.0
  %2745 = vmatmul.mubr.f32.gmra.mrb[0].mxu0 %v2414
  %v2746 = vpop.f32.mrb[0].mxu0
  %v2747 = vadd.f32 0.0, %v2746
  %v2748 = vpop.f32.mrb[0].mxu0
  %2749 = vmatprep.mubr.f32.mxu0 0.0
  %2750 = vmatmul.mubr.f32.gmra.mrb[0].mxu0 %v2417
  %v2751 = vpop.f32.mrb[0].mxu0
  %v2752 = vadd.f32 0.0, %v2751
  %v2753 = vpop.f32.mrb[0].mxu0
  %2754 = vmatprep.mubr.f32.mxu0 0.0
  %2755 = vmatmul.mubr.f32.gmra.mrb[0].mxu0 %v2420
  %v2756 = vpop.f32.mrb[0].mxu0
  %v2757 = vadd.f32 0.0, %v2756
  %v2758 = vpop.f32.mrb[0].mxu0
  %2759 = vmatprep.mubr.f32.mxu0 0.0
  %2760 = vmatmul.mubr.f32.gmra.mrb[0].mxu0 %v2423
  %v2761 = vpop.f32.mrb[0].mxu0
  %v2762 = vadd.f32 0.0, %v2761
  %v2763 = vpop.f32.mrb[0].mxu0
  %2764 = vmatprep.mubr.f32.mxu0 0.0
  %2765 = vmatmul.mubr.f32.gmra.mrb[0].mxu0 %v2426
  %v2766 = vpop.f32.mrb[0].mxu0
  %v2767 = vadd.f32 0.0, %v2766
  %v2768 = vpop.f32.mrb[0].mxu0
  %2769 = vmatprep.mubr.f32.mxu0 0.0
  %2770 = vmatmul.mubr.f32.gmra.mrb[0].mxu0 %v2429
  %v2771 = vpop.f32.mrb[0].mxu0
  %v2772 = vadd.f32 0.0, %v2771
  %v2773 = vpop.f32.mrb[0].mxu0
  %2774 = vmatprep.mubr.f32.mxu0 0.0
  %2775 = vmatmul.mubr.f32.gmra.mrb[0].mxu0 %v2432
  %v2776 = vpop.f32.mrb[0].mxu0
  %v2777 = vadd.f32 0.0, %v2776
  %v2778 = vpop.f32.mrb[0].mxu0
  %2779 = vmatprep.mubr.f32.mxu0 0.0
  %2780 = vmatmul.mubr.f32.gmra.mrb[0].mxu0 %v2435
  %v2781 = vpop.f32.mrb[0].mxu0
  %v2782 = vadd.f32 0.0, %v2781
  %v2783 = vpop.f32.mrb[0].mxu0
  %2784 = vmatprep.mubr.f32.mxu0 0.0
  %2785 = vmatmul.mubr.f32.gmra.mrb[0].mxu0 %v2438
  %v2786 = vpop.f32.mrb[0].mxu0
  %v2787 = vadd.f32 0.0, %v2786
  %v2788 = vpop.f32.mrb[0].mxu0
  %2789 = vmatprep.mubr.f32.mxu0 0.0
  %2790 = vmatmul.mubr.f32.gmra.mrb[0].mxu0 %v2441
  %v2791 = vpop.f32.mrb[0].mxu0
  %v2792 = vadd.f32 0.0, %v2791
  %v2793 = vpop.f32.mrb[0].mxu0
  %2794 = vmatprep.mubr.f32.mxu0 0.0
  %2795 = vmatmul.mubr.f32.gmra.mrb[0].mxu0 %v2444
  %v2796 = vpop.f32.mrb[0].mxu0
  %v2797 = vadd.f32 0.0, %v2796
  %v2798 = vpop.f32.mrb[0].mxu0
  %2799 = vmatprep.mubr.f32.mxu0 0.0
  %2800 = vmatmul.mubr.f32.gmra.mrb[0].mxu0 %v2447
  %v2801 = vpop.f32.mrb[0].mxu0
  %v2802 = vadd.f32 0.0, %v2801
  %v2803 = vpop.f32.mrb[0].mxu0
  %2804 = vmatprep.mubr.f32.mxu0 0.0
  %2805 = vmatmul.mubr.f32.gmra.mrb[0].mxu0 %v2450
  %v2806 = vpop.f32.mrb[0].mxu0
  %v2807 = vadd.f32 0.0, %v2806
  %v2808 = vpop.f32.mrb[0].mxu0
  %2809 = vmatprep.mubr.f32.mxu0 0.0
  %2810 = vmatmul.mubr.f32.gmra.mrb[0].mxu0 %v2453
  %v2811 = vpop.f32.mrb[0].mxu0
  %v2812 = vadd.f32 0.0, %v2811
  %v2813 = vpop.f32.mrb[0].mxu0
  %2814 = vmatprep.mubr.f32.mxu0 0.0
  %2815 = vmatmul.mubr.f32.gmra.mrb[0].mxu0 %v2456
  %v2816 = vpop.f32.mrb[0].mxu0
  %v2817 = vadd.f32 0.0, %v2816
  %v2818 = vpop.f32.mrb[0].mxu0
  %2819 = vmatprep.mubr.f32.mxu0 0.0
  %2820 = vmatmul.mubr.f32.gmra.mrb[0].mxu0 %v2459
  %v2821 = vpop.f32.mrb[0].mxu0
  %v2822 = vadd.f32 0.0, %v2821
  %v2823 = vpop.f32.mrb[0].mxu0
  %2824 = vmatprep.mubr.f32.mxu0 0.0
  %2825 = vmatmul.mubr.f32.gmra.mrb[0].mxu0 %v2462
  %v2826 = vpop.f32.mrb[0].mxu0
  %v2827 = vadd.f32 0.0, %v2826
  %v2828 = vpop.f32.mrb[0].mxu0
  %2829 = vmatprep.mubr.f32.mxu0 0.0
  %2830 = vmatmul.mubr.f32.gmra.mrb[0].mxu0 %v2465
  %v2831 = vpop.f32.mrb[0].mxu0
  %v2832 = vadd.f32 0.0, %v2831
  %v2833 = vpop.f32.mrb[0].mxu0
  %2834 = vmatprep.mubr.f32.mxu0 0.0
  %2835 = vmatmul.mubr.f32.gmra.mrb[0].mxu0 %v2468
  %v2836 = vpop.f32.mrb[0].mxu0
  %v2837 = vadd.f32 0.0, %v2836
  %v2838 = vpop.f32.mrb[0].mxu0
  %2839 = vmatprep.mubr.f32.mxu0 0.0
  %2840 = vmatmul.mubr.f32.gmra.mrb[0].mxu0 %v2471
  %v2841 = vpop.f32.mrb[0].mxu0
  %v2842 = vadd.f32 0.0, %v2841
  %v2843 = vpop.f32.mrb[0].mxu0
  %2844 = vmatprep.mubr.f32.mxu0 0.0
  %2845 = vmatmul.mubr.f32.gmra.mrb[0].mxu0 %v2474
  %v2846 = vpop.f32.mrb[0].mxu0
  %v2847 = vadd.f32 0.0, %v2846
  %v2848 = vpop.f32.mrb[0].mxu0
  %2849 = vmatprep.mubr.f32.mxu0 0.0
  %2850 = vmatmul.mubr.f32.gmra.mrb[0].mxu0 %v2477
  %v2851 = vpop.f32.mrb[0].mxu0
  %v2852 = vadd.f32 0.0, %v2851
  %v2853 = vpop.f32.mrb[0].mxu0
  %2854 = vmatprep.mubr.f32.mxu0 0.0
  %2855 = vmatmul.mubr.f32.gmra.mrb[0].mxu0 %v2480
  %v2856 = vpop.f32.mrb[0].mxu0
  %v2857 = vadd.f32 0.0, %v2856
  %v2858 = vpop.f32.mrb[0].mxu0
  %2859 = vmatprep.mubr.f32.mxu0 0.0
  %2860 = vmatmul.mubr.f32.gmra.mrb[0].mxu0 %v2483
  %v2861 = vpop.f32.mrb[0].mxu0
  %v2862 = vadd.f32 0.0, %v2861
  %v2863 = vpop.f32.mrb[0].mxu0
  %2864 = vmatprep.mubr.f32.mxu0 0.0
  %2865 = vmatmul.mubr.f32.gmra.mrb[0].mxu0 %v2486
  %v2866 = vpop.f32.mrb[0].mxu0
  %v2867 = vadd.f32 0.0, %v2866
  %v2868 = vpop.f32.mrb[0].mxu0
  %2869 = vmatprep.mubr.f32.mxu0 0.0
  %2870 = vmatmul.mubr.f32.gmra.mrb[0].mxu0 %v2489
  %v2871 = vpop.f32.mrb[0].mxu0
  %v2872 = vadd.f32 0.0, %v2871
  %v2873 = vpop.f32.mrb[0].mxu0
  %2874 = vmatprep.mubr.f32.mxu0 0.0
  %2875 = vmatmul.mubr.f32.gmra.mrb[0].mxu0 %v2492
  %v2876 = vpop.f32.mrb[0].mxu0
  %v2877 = vadd.f32 0.0, %v2876
  %v2878 = vpop.f32.mrb[0].mxu0
  %2879 = vmatprep.mubr.f32.mxu0 0.0
  %2880 = vmatmul.mubr.f32.gmra.mrb[0].mxu0 %v2495
  %v2881 = vpop.f32.mrb[0].mxu0
  %v2882 = vadd.f32 0.0, %v2881
  %v2883 = vpop.f32.mrb[0].mxu0
  %2884 = vdwg.mxu0
  %v2885 = vadd.f32 %v2175, %v2567
  %v2886 = vadd.f32 %v2176, %v2572
  %v2887 = vadd.f32 %v2177, %v2577
  %v2888 = vadd.f32 %v2178, %v2582
  %v2889 = vadd.f32 %v2179, %v2587
  %v2890 = vadd.f32 %v2180, %v2592
  %v2891 = vadd.f32 %v2181, %v2597
  %v2892 = vadd.f32 %v2182, %v2602
  %v2893 = vadd.f32 %v2183, %v2607
  %v2894 = vadd.f32 %v2184, %v2612
  %v2895 = vadd.f32 %v2185, %v2617
  %v2896 = vadd.f32 %v2186, %v2622
  %v2897 = vadd.f32 %v2187, %v2627
  %v2898 = vadd.f32 %v2188, %v2632
  %v2899 = vadd.f32 %v2189, %v2637
  %v2900 = vadd.f32 %v2190, %v2642
  %v2901 = vadd.f32 %v2191, %v2647
  %v2902 = vadd.f32 %v2192, %v2652
  %v2903 = vadd.f32 %v2193, %v2657
  %v2904 = vadd.f32 %v2194, %v2662
  %v2905 = vadd.f32 %v2195, %v2667
  %v2906 = vadd.f32 %v2196, %v2672
  %v2907 = vadd.f32 %v2197, %v2677
  %v2908 = vadd.f32 %v2198, %v2682
  %v2909 = vadd.f32 %v2199, %v2687
  %v2910 = vadd.f32 %v2200, %v2692
  %v2911 = vadd.f32 %v2201, %v2697
  %v2912 = vadd.f32 %v2202, %v2702
  %v2913 = vadd.f32 %v2203, %v2707
  %v2914 = vadd.f32 %v2204, %v2712
  %v2915 = vadd.f32 %v2205, %v2717
  %v2916 = vadd.f32 %v2206, %v2722
  %v2917 = vadd.f32 %v2207, %v2727
  %v2918 = vadd.f32 %v2208, %v2732
  %v2919 = vadd.f32 %v2209, %v2737
  %v2920 = vadd.f32 %v2210, %v2742
  %v2921 = vadd.f32 %v2211, %v2747
  %v2922 = vadd.f32 %v2212, %v2752
  %v2923 = vadd.f32 %v2213, %v2757
  %v2924 = vadd.f32 %v2214, %v2762
  %v2925 = vadd.f32 %v2215, %v2767
  %v2926 = vadd.f32 %v2216, %v2772
  %v2927 = vadd.f32 %v2217, %v2777
  %v2928 = vadd.f32 %v2218, %v2782
  %v2929 = vadd.f32 %v2219, %v2787
  %v2930 = vadd.f32 %v2220, %v2792
  %v2931 = vadd.f32 %v2221, %v2797
  %v2932 = vadd.f32 %v2222, %v2802
  %v2933 = vadd.f32 %v2223, %v2807
  %v2934 = vadd.f32 %v2224, %v2812
  %v2935 = vadd.f32 %v2225, %v2817
  %v2936 = vadd.f32 %v2226, %v2822
  %v2937 = vadd.f32 %v2227, %v2827
  %v2938 = vadd.f32 %v2228, %v2832
  %v2939 = vadd.f32 %v2229, %v2837
  %v2940 = vadd.f32 %v2230, %v2842
  %v2941 = vadd.f32 %v2231, %v2847
  %v2942 = vadd.f32 %v2232, %v2852
  %v2943 = vadd.f32 %v2233, %v2857
  %v2944 = vadd.f32 %v2234, %v2862
  %v2945 = vadd.f32 %v2235, %v2867
  %v2946 = vadd.f32 %v2236, %v2872
  %v2947 = vadd.f32 %v2237, %v2877
  %v2948 = vadd.f32 %v2238, %v2882
  %v2949 = vld [vmem:[%s105 + $0x1] sm:$0xff]
  %v2950 = vld [vmem:[%s105 + $0x9] sm:$0xff]
  %v2951 = vld [vmem:[%s105 + $0x19] sm:$0xff]
  %v2952 = vld [vmem:[%s105 + $0x21] sm:$0xff]
  %v2953 = vld [vmem:[%s105 + $0x31] sm:$0xff]
  %v2954 = vld [vmem:[%s105 + $0x39] sm:$0xff]
  %v2955 = vld [vmem:[%s105 + $0x49] sm:$0xff]
  %v2956 = vld [vmem:[%s105 + $0x51] sm:$0xff]
  %v2957 = vld [vmem:[%s105 + $0x61] sm:$0xff]
  %v2958 = vld [vmem:[%s105 + $0x69] sm:$0xff]
  %v2959 = vld [vmem:[%s105 + $0x79] sm:$0xff]
  %v2960 = vld [vmem:[%s105 + $0x81] sm:$0xff]
  %v2961 = vld [vmem:[%s105 + $0x91] sm:$0xff]
  %v2962 = vld [vmem:[%s105 + $0x99] sm:$0xff]
  %v2963 = vld [vmem:[%s105 + $0xa9] sm:$0xff]
  %v2964 = vld [vmem:[%s105 + $0xb1] sm:$0xff]
  %v2965 = vld [vmem:[%s105 + $0xc1] sm:$0xff]
  %v2966 = vld [vmem:[%s105 + $0xc9] sm:$0xff]
  %v2967 = vld [vmem:[%s105 + $0xd9] sm:$0xff]
  %v2968 = vld [vmem:[%s105 + $0xe1] sm:$0xff]
  %v2969 = vld [vmem:[%s105 + $0xf1] sm:$0xff]
  %v2970 = vld [vmem:[%s105 + $0xf9] sm:$0xff]
  %v2971 = vld [vmem:[%s105 + $0x109] sm:$0xff]
  %v2972 = vld [vmem:[%s105 + $0x111] sm:$0xff]
  %v2973 = vld [vmem:[%s105 + $0x121] sm:$0xff]
  %v2974 = vld [vmem:[%s105 + $0x129] sm:$0xff]
  %v2975 = vld [vmem:[%s105 + $0x139] sm:$0xff]
  %v2976 = vld [vmem:[%s105 + $0x141] sm:$0xff]
  %v2977 = vld [vmem:[%s105 + $0x151] sm:$0xff]
  %v2978 = vld [vmem:[%s105 + $0x159] sm:$0xff]
  %v2979 = vld [vmem:[%s105 + $0x169] sm:$0xff]
  %v2980 = vld [vmem:[%s105 + $0x171] sm:$0xff]
  %v2981 = vld [vmem:[%s105 + $0x1b1] sm:$0xff]
  %v2982 = vld [vmem:[%s105 + $0x1b9] sm:$0xff]
  %v2983 = vld [vmem:[%s105 + $0x1c9] sm:$0xff]
  %v2984 = vld [vmem:[%s105 + $0x1d1] sm:$0xff]
  %v2985 = vld [vmem:[%s105 + $0x1e1] sm:$0xff]
  %v2986 = vld [vmem:[%s105 + $0x1e9] sm:$0xff]
  %v2987 = vld [vmem:[%s105 + $0x1f9] sm:$0xff]
  %v2988 = vld [vmem:[%s105 + $0x201] sm:$0xff]
  %v2989 = vld [vmem:[%s105 + $0x211] sm:$0xff]
  %v2990 = vld [vmem:[%s105 + $0x219] sm:$0xff]
  %v2991 = vld [vmem:[%s105 + $0x229] sm:$0xff]
  %v2992 = vld [vmem:[%s105 + $0x231] sm:$0xff]
  %v2993 = vld [vmem:[%s105 + $0x241] sm:$0xff]
  %v2994 = vld [vmem:[%s105 + $0x249] sm:$0xff]
  %v2995 = vld [vmem:[%s105 + $0x259] sm:$0xff]
  %v2996 = vld [vmem:[%s105 + $0x261] sm:$0xff]
  %v2997 = vld [vmem:[%s105 + $0x271] sm:$0xff]
  %v2998 = vld [vmem:[%s105 + $0x279] sm:$0xff]
  %v2999 = vld [vmem:[%s105 + $0x289] sm:$0xff]
  %v3000 = vld [vmem:[%s105 + $0x291] sm:$0xff]
  %v3001 = vld [vmem:[%s105 + $0x2a1] sm:$0xff]
  %v3002 = vld [vmem:[%s105 + $0x2a9] sm:$0xff]
  %v3003 = vld [vmem:[%s105 + $0x2b9] sm:$0xff]
  %v3004 = vld [vmem:[%s105 + $0x2c1] sm:$0xff]
  %v3005 = vld [vmem:[%s105 + $0x2d1] sm:$0xff]
  %v3006 = vld [vmem:[%s105 + $0x2d9] sm:$0xff]
  %v3007 = vld [vmem:[%s105 + $0x2e9] sm:$0xff]
  %v3008 = vld [vmem:[%s105 + $0x2f1] sm:$0xff]
  %v3009 = vld [vmem:[%s105 + $0x301] sm:$0xff]
  %v3010 = vld [vmem:[%s105 + $0x309] sm:$0xff]
  %v3011 = vld [vmem:[%s105 + $0x319] sm:$0xff]
  %v3012 = vld [vmem:[%s105 + $0x321] sm:$0xff]
  %s3013 = scalar_lea.vmem %s1, 16
  %v3014 = vld [vmem:[%s3013] sm:$0xf]
  %v3016 = vsel %vm90, %v2949, 0
  %v3019 = vsel %vm90, %v2950, 0
  %v3022 = vsel %vm90, %v2951, 0
  %v3025 = vsel %vm90, %v2952, 0
  %v3028 = vsel %vm90, %v2953, 0
  %v3031 = vsel %vm90, %v2954, 0
  %v3034 = vsel %vm90, %v2955, 0
  %v3037 = vsel %vm90, %v2956, 0
  %v3040 = vsel %vm90, %v2957, 0
  %v3043 = vsel %vm90, %v2958, 0
  %v3046 = vsel %vm90, %v2959, 0
  %v3049 = vsel %vm90, %v2960, 0
  %v3052 = vsel %vm90, %v2961, 0
  %v3055 = vsel %vm90, %v2962, 0
  %v3058 = vsel %vm90, %v2963, 0
  %v3061 = vsel %vm90, %v2964, 0
  %v3064 = vsel %vm90, %v2965, 0
  %v3067 = vsel %vm90, %v2966, 0
  %v3070 = vsel %vm90, %v2967, 0
  %v3073 = vsel %vm90, %v2968, 0
  %v3076 = vsel %vm90, %v2969, 0
  %v3079 = vsel %vm90, %v2970, 0
  %v3082 = vsel %vm90, %v2971, 0
  %v3085 = vsel %vm90, %v2972, 0
  %v3088 = vsel %vm90, %v2973, 0
  %v3091 = vsel %vm90, %v2974, 0
  %v3094 = vsel %vm90, %v2975, 0
  %v3097 = vsel %vm90, %v2976, 0
  %v3100 = vsel %vm90, %v2977, 0
  %v3103 = vsel %vm90, %v2978, 0
  %v3106 = vsel %vm90, %v2979, 0
  %v3109 = vsel %vm90, %v2980, 0
  %v3112 = vsel %vm90, %v2981, 0
  %v3115 = vsel %vm90, %v2982, 0
  %v3118 = vsel %vm90, %v2983, 0
  %v3121 = vsel %vm90, %v2984, 0
  %v3124 = vsel %vm90, %v2985, 0
  %v3127 = vsel %vm90, %v2986, 0
  %v3130 = vsel %vm90, %v2987, 0
  %v3133 = vsel %vm90, %v2988, 0
  %v3136 = vsel %vm90, %v2989, 0
  %v3139 = vsel %vm90, %v2990, 0
  %v3142 = vsel %vm90, %v2991, 0
  %v3145 = vsel %vm90, %v2992, 0
  %v3148 = vsel %vm90, %v2993, 0
  %v3151 = vsel %vm90, %v2994, 0
  %v3154 = vsel %vm90, %v2995, 0
  %v3157 = vsel %vm90, %v2996, 0
  %v3160 = vsel %vm90, %v2997, 0
  %v3163 = vsel %vm90, %v2998, 0
  %v3166 = vsel %vm90, %v2999, 0
  %v3169 = vsel %vm90, %v3000, 0
  %v3172 = vsel %vm90, %v3001, 0
  %v3175 = vsel %vm90, %v3002, 0
  %v3178 = vsel %vm90, %v3003, 0
  %v3181 = vsel %vm90, %v3004, 0
  %v3184 = vsel %vm90, %v3005, 0
  %v3187 = vsel %vm90, %v3006, 0
  %v3190 = vsel %vm90, %v3007, 0
  %v3193 = vsel %vm90, %v3008, 0
  %v3196 = vsel %vm90, %v3009, 0
  %v3199 = vsel %vm90, %v3010, 0
  %v3202 = vsel %vm90, %v3011, 0
  %v3205 = vsel %vm90, %v3012, 0
  %v3208 = vsel %vm560, %v3014, 0
  %3210 = vmatprep.subr.mxu0 0.0
  %3211 = vmatpush1.msra.mxu0 %v3208
  %3212 = vmatprep.subr.mxu0 0.0
  %3213 = vmatpush1.msra.mxu0 0.0
  %3214 = vmatprep.subr.mxu0 0.0
  %3215 = vmatpush1.msra.mxu0 0.0
  %3216 = vmatprep.subr.mxu0 0.0
  %3217 = vmatpush1.msra.mxu0 0.0
  %3218 = vmatprep.subr.mxu0 0.0
  %3219 = vmatpush1.msra.mxu0 0.0
  %3220 = vmatprep.subr.mxu0 0.0
  %3221 = vmatpush1.msra.mxu0 0.0
  %3222 = vmatprep.subr.mxu0 0.0
  %3223 = vmatpush1.msra.mxu0 0.0
  %3224 = vmatprep.subr.mxu0 0.0
  %3225 = vmatpush1.msra.mxu0 0.0
  %3226 = vmatprep.subr.mxu0 0.0
  %3227 = vmatpush1.msra.mxu0 0.0
  %3228 = vmatprep.subr.mxu0 0.0
  %3229 = vmatpush1.msra.mxu0 0.0
  %3230 = vmatprep.subr.mxu0 0.0
  %3231 = vmatpush1.msra.mxu0 0.0
  %3232 = vmatprep.subr.mxu0 0.0
  %3233 = vmatpush1.msra.mxu0 0.0
  %3234 = vmatprep.subr.mxu0 0.0
  %3235 = vmatpush1.msra.mxu0 0.0
  %3236 = vmatprep.subr.mxu0 0.0
  %3237 = vmatpush1.msra.mxu0 0.0
  %3238 = vmatprep.subr.mxu0 0.0
  %3239 = vmatpush1.msra.mxu0 0.0
  %3240 = vmatprep.subr.mxu0 0.0
  %3241 = vmatpush1.msra.mxu0 0.0
  %3242 = vmatprep.subr.mxu0 0.0
  %3243 = vmatpush1.msra.mxu0 0.0
  %3244 = vmatprep.subr.mxu0 0.0
  %3245 = vmatpush1.msra.mxu0 0.0
  %3246 = vmatprep.subr.mxu0 0.0
  %3247 = vmatpush1.msra.mxu0 0.0
  %3248 = vmatprep.subr.mxu0 0.0
  %3249 = vmatpush1.msra.mxu0 0.0
  %3250 = vmatprep.subr.mxu0 0.0
  %3251 = vmatpush1.msra.mxu0 0.0
  %3252 = vmatprep.subr.mxu0 0.0
  %3253 = vmatpush1.msra.mxu0 0.0
  %3254 = vmatprep.subr.mxu0 0.0
  %3255 = vmatpush1.msra.mxu0 0.0
  %3256 = vmatprep.subr.mxu0 0.0
  %3257 = vmatpush1.msra.mxu0 0.0
  %3258 = vmatprep.subr.mxu0 0.0
  %3259 = vmatpush1.msra.mxu0 0.0
  %3260 = vmatprep.subr.mxu0 0.0
  %3261 = vmatpush1.msra.mxu0 0.0
  %3262 = vmatprep.subr.mxu0 0.0
  %3263 = vmatpush1.msra.mxu0 0.0
  %3264 = vmatprep.subr.mxu0 0.0
  %3265 = vmatpush1.msra.mxu0 0.0
  %3266 = vmatprep.subr.mxu0 0.0
  %3267 = vmatpush1.msra.mxu0 0.0
  %3268 = vmatprep.subr.mxu0 0.0
  %3269 = vmatpush1.msra.mxu0 0.0
  %3270 = vmatprep.subr.mxu0 0.0
  %3271 = vmatpush1.msra.mxu0 0.0
  %3272 = vmatprep.subr.mxu0 0.0
  %3273 = vmatpush1.msra.mxu0 0.0
  %3274 = vmatprep.mubr.f32.mxu0 0.0
  %3275 = vmatmul.mubr.f32.gmra.mrb[0].mxu0 %v3016
  %v3276 = vpop.f32.mrb[0].mxu0
  %v3277 = vadd.f32 0.0, %v3276
  %v3278 = vpop.f32.mrb[0].mxu0
  %3279 = vmatprep.mubr.f32.mxu0 0.0
  %3280 = vmatmul.mubr.f32.gmra.mrb[0].mxu0 %v3019
  %v3281 = vpop.f32.mrb[0].mxu0
  %v3282 = vadd.f32 0.0, %v3281
  %v3283 = vpop.f32.mrb[0].mxu0
  %3284 = vmatprep.mubr.f32.mxu0 0.0
  %3285 = vmatmul.mubr.f32.gmra.mrb[0].mxu0 %v3022
  %v3286 = vpop.f32.mrb[0].mxu0
  %v3287 = vadd.f32 0.0, %v3286
  %v3288 = vpop.f32.mrb[0].mxu0
  %3289 = vmatprep.mubr.f32.mxu0 0.0
  %3290 = vmatmul.mubr.f32.gmra.mrb[0].mxu0 %v3025
  %v3291 = vpop.f32.mrb[0].mxu0
  %v3292 = vadd.f32 0.0, %v3291
  %v3293 = vpop.f32.mrb[0].mxu0
  %3294 = vmatprep.mubr.f32.mxu0 0.0
  %3295 = vmatmul.mubr.f32.gmra.mrb[0].mxu0 %v3028
  %v3296 = vpop.f32.mrb[0].mxu0
  %v3297 = vadd.f32 0.0, %v3296
  %v3298 = vpop.f32.mrb[0].mxu0
  %3299 = vmatprep.mubr.f32.mxu0 0.0
  %3300 = vmatmul.mubr.f32.gmra.mrb[0].mxu0 %v3031
  %v3301 = vpop.f32.mrb[0].mxu0
  %v3302 = vadd.f32 0.0, %v3301
  %v3303 = vpop.f32.mrb[0].mxu0
  %3304 = vmatprep.mubr.f32.mxu0 0.0
  %3305 = vmatmul.mubr.f32.gmra.mrb[0].mxu0 %v3034
  %v3306 = vpop.f32.mrb[0].mxu0
  %v3307 = vadd.f32 0.0, %v3306
  %v3308 = vpop.f32.mrb[0].mxu0
  %3309 = vmatprep.mubr.f32.mxu0 0.0
  %3310 = vmatmul.mubr.f32.gmra.mrb[0].mxu0 %v3037
  %v3311 = vpop.f32.mrb[0].mxu0
  %v3312 = vadd.f32 0.0, %v3311
  %v3313 = vpop.f32.mrb[0].mxu0
  %3314 = vmatprep.mubr.f32.mxu0 0.0
  %3315 = vmatmul.mubr.f32.gmra.mrb[0].mxu0 %v3040
  %v3316 = vpop.f32.mrb[0].mxu0
  %v3317 = vadd.f32 0.0, %v3316
  %v3318 = vpop.f32.mrb[0].mxu0
  %3319 = vmatprep.mubr.f32.mxu0 0.0
  %3320 = vmatmul.mubr.f32.gmra.mrb[0].mxu0 %v3043
  %v3321 = vpop.f32.mrb[0].mxu0
  %v3322 = vadd.f32 0.0, %v3321
  %v3323 = vpop.f32.mrb[0].mxu0
  %3324 = vmatprep.mubr.f32.mxu0 0.0
  %3325 = vmatmul.mubr.f32.gmra.mrb[0].mxu0 %v3046
  %v3326 = vpop.f32.mrb[0].mxu0
  %v3327 = vadd.f32 0.0, %v3326
  %v3328 = vpop.f32.mrb[0].mxu0
  %3329 = vmatprep.mubr.f32.mxu0 0.0
  %3330 = vmatmul.mubr.f32.gmra.mrb[0].mxu0 %v3049
  %v3331 = vpop.f32.mrb[0].mxu0
  %v3332 = vadd.f32 0.0, %v3331
  %v3333 = vpop.f32.mrb[0].mxu0
  %3334 = vmatprep.mubr.f32.mxu0 0.0
  %3335 = vmatmul.mubr.f32.gmra.mrb[0].mxu0 %v3052
  %v3336 = vpop.f32.mrb[0].mxu0
  %v3337 = vadd.f32 0.0, %v3336
  %v3338 = vpop.f32.mrb[0].mxu0
  %3339 = vmatprep.mubr.f32.mxu0 0.0
  %3340 = vmatmul.mubr.f32.gmra.mrb[0].mxu0 %v3055
  %v3341 = vpop.f32.mrb[0].mxu0
  %v3342 = vadd.f32 0.0, %v3341
  %v3343 = vpop.f32.mrb[0].mxu0
  %3344 = vmatprep.mubr.f32.mxu0 0.0
  %3345 = vmatmul.mubr.f32.gmra.mrb[0].mxu0 %v3058
  %v3346 = vpop.f32.mrb[0].mxu0
  %v3347 = vadd.f32 0.0, %v3346
  %v3348 = vpop.f32.mrb[0].mxu0
  %3349 = vmatprep.mubr.f32.mxu0 0.0
  %3350 = vmatmul.mubr.f32.gmra.mrb[0].mxu0 %v3061
  %v3351 = vpop.f32.mrb[0].mxu0
  %v3352 = vadd.f32 0.0, %v3351
  %v3353 = vpop.f32.mrb[0].mxu0
  %3354 = vmatprep.mubr.f32.mxu0 0.0
  %3355 = vmatmul.mubr.f32.gmra.mrb[0].mxu0 %v3064
  %v3356 = vpop.f32.mrb[0].mxu0
  %v3357 = vadd.f32 0.0, %v3356
  %v3358 = vpop.f32.mrb[0].mxu0
  %3359 = vmatprep.mubr.f32.mxu0 0.0
  %3360 = vmatmul.mubr.f32.gmra.mrb[0].mxu0 %v3067
  %v3361 = vpop.f32.mrb[0].mxu0
  %v3362 = vadd.f32 0.0, %v3361
  %v3363 = vpop.f32.mrb[0].mxu0
  %3364 = vmatprep.mubr.f32.mxu0 0.0
  %3365 = vmatmul.mubr.f32.gmra.mrb[0].mxu0 %v3070
  %v3366 = vpop.f32.mrb[0].mxu0
  %v3367 = vadd.f32 0.0, %v3366
  %v3368 = vpop.f32.mrb[0].mxu0
  %3369 = vmatprep.mubr.f32.mxu0 0.0
  %3370 = vmatmul.mubr.f32.gmra.mrb[0].mxu0 %v3073
  %v3371 = vpop.f32.mrb[0].mxu0
  %v3372 = vadd.f32 0.0, %v3371
  %v3373 = vpop.f32.mrb[0].mxu0
  %3374 = vmatprep.mubr.f32.mxu0 0.0
  %3375 = vmatmul.mubr.f32.gmra.mrb[0].mxu0 %v3076
  %v3376 = vpop.f32.mrb[0].mxu0
  %v3377 = vadd.f32 0.0, %v3376
  %v3378 = vpop.f32.mrb[0].mxu0
  %3379 = vmatprep.mubr.f32.mxu0 0.0
  %3380 = vmatmul.mubr.f32.gmra.mrb[0].mxu0 %v3079
  %v3381 = vpop.f32.mrb[0].mxu0
  %v3382 = vadd.f32 0.0, %v3381
  %v3383 = vpop.f32.mrb[0].mxu0
  %3384 = vmatprep.mubr.f32.mxu0 0.0
  %3385 = vmatmul.mubr.f32.gmra.mrb[0].mxu0 %v3082
  %v3386 = vpop.f32.mrb[0].mxu0
  %v3387 = vadd.f32 0.0, %v3386
  %v3388 = vpop.f32.mrb[0].mxu0
  %3389 = vmatprep.mubr.f32.mxu0 0.0
  %3390 = vmatmul.mubr.f32.gmra.mrb[0].mxu0 %v3085
  %v3391 = vpop.f32.mrb[0].mxu0
  %v3392 = vadd.f32 0.0, %v3391
  %v3393 = vpop.f32.mrb[0].mxu0
  %3394 = vmatprep.mubr.f32.mxu0 0.0
  %3395 = vmatmul.mubr.f32.gmra.mrb[0].mxu0 %v3088
  %v3396 = vpop.f32.mrb[0].mxu0
  %v3397 = vadd.f32 0.0, %v3396
  %v3398 = vpop.f32.mrb[0].mxu0
  %3399 = vmatprep.mubr.f32.mxu0 0.0
  %3400 = vmatmul.mubr.f32.gmra.mrb[0].mxu0 %v3091
  %v3401 = vpop.f32.mrb[0].mxu0
  %v3402 = vadd.f32 0.0, %v3401
  %v3403 = vpop.f32.mrb[0].mxu0
  %3404 = vmatprep.mubr.f32.mxu0 0.0
  %3405 = vmatmul.mubr.f32.gmra.mrb[0].mxu0 %v3094
  %v3406 = vpop.f32.mrb[0].mxu0
  %v3407 = vadd.f32 0.0, %v3406
  %v3408 = vpop.f32.mrb[0].mxu0
  %3409 = vmatprep.mubr.f32.mxu0 0.0
  %3410 = vmatmul.mubr.f32.gmra.mrb[0].mxu0 %v3097
  %v3411 = vpop.f32.mrb[0].mxu0
  %v3412 = vadd.f32 0.0, %v3411
  %v3413 = vpop.f32.mrb[0].mxu0
  %3414 = vmatprep.mubr.f32.mxu0 0.0
  %3415 = vmatmul.mubr.f32.gmra.mrb[0].mxu0 %v3100
  %v3416 = vpop.f32.mrb[0].mxu0
  %v3417 = vadd.f32 0.0, %v3416
  %v3418 = vpop.f32.mrb[0].mxu0
  %3419 = vmatprep.mubr.f32.mxu0 0.0
  %3420 = vmatmul.mubr.f32.gmra.mrb[0].mxu0 %v3103
  %v3421 = vpop.f32.mrb[0].mxu0
  %v3422 = vadd.f32 0.0, %v3421
  %v3423 = vpop.f32.mrb[0].mxu0
  %3424 = vmatprep.mubr.f32.mxu0 0.0
  %3425 = vmatmul.mubr.f32.gmra.mrb[0].mxu0 %v3106
  %v3426 = vpop.f32.mrb[0].mxu0
  %v3427 = vadd.f32 0.0, %v3426
  %v3428 = vpop.f32.mrb[0].mxu0
  %3429 = vmatprep.mubr.f32.mxu0 0.0
  %3430 = vmatmul.mubr.f32.gmra.mrb[0].mxu0 %v3109
  %v3431 = vpop.f32.mrb[0].mxu0
  %v3432 = vadd.f32 0.0, %v3431
  %v3433 = vpop.f32.mrb[0].mxu0
  %3434 = vmatprep.mubr.f32.mxu0 0.0
  %3435 = vmatmul.mubr.f32.gmra.mrb[0].mxu0 %v3112
  %v3436 = vpop.f32.mrb[0].mxu0
  %v3437 = vadd.f32 0.0, %v3436
  %v3438 = vpop.f32.mrb[0].mxu0
  %3439 = vmatprep.mubr.f32.mxu0 0.0
  %3440 = vmatmul.mubr.f32.gmra.mrb[0].mxu0 %v3115
  %v3441 = vpop.f32.mrb[0].mxu0
  %v3442 = vadd.f32 0.0, %v3441
  %v3443 = vpop.f32.mrb[0].mxu0
  %3444 = vmatprep.mubr.f32.mxu0 0.0
  %3445 = vmatmul.mubr.f32.gmra.mrb[0].mxu0 %v3118
  %v3446 = vpop.f32.mrb[0].mxu0
  %v3447 = vadd.f32 0.0, %v3446
  %v3448 = vpop.f32.mrb[0].mxu0
  %3449 = vmatprep.mubr.f32.mxu0 0.0
  %3450 = vmatmul.mubr.f32.gmra.mrb[0].mxu0 %v3121
  %v3451 = vpop.f32.mrb[0].mxu0
  %v3452 = vadd.f32 0.0, %v3451
  %v3453 = vpop.f32.mrb[0].mxu0
  %3454 = vmatprep.mubr.f32.mxu0 0.0
  %3455 = vmatmul.mubr.f32.gmra.mrb[0].mxu0 %v3124
  %v3456 = vpop.f32.mrb[0].mxu0
  %v3457 = vadd.f32 0.0, %v3456
  %v3458 = vpop.f32.mrb[0].mxu0
  %3459 = vmatprep.mubr.f32.mxu0 0.0
  %3460 = vmatmul.mubr.f32.gmra.mrb[0].mxu0 %v3127
  %v3461 = vpop.f32.mrb[0].mxu0
  %v3462 = vadd.f32 0.0, %v3461
  %v3463 = vpop.f32.mrb[0].mxu0
  %3464 = vmatprep.mubr.f32.mxu0 0.0
  %3465 = vmatmul.mubr.f32.gmra.mrb[0].mxu0 %v3130
  %v3466 = vpop.f32.mrb[0].mxu0
  %v3467 = vadd.f32 0.0, %v3466
  %v3468 = vpop.f32.mrb[0].mxu0
  %3469 = vmatprep.mubr.f32.mxu0 0.0
  %3470 = vmatmul.mubr.f32.gmra.mrb[0].mxu0 %v3133
  %v3471 = vpop.f32.mrb[0].mxu0
  %v3472 = vadd.f32 0.0, %v3471
  %v3473 = vpop.f32.mrb[0].mxu0
  %3474 = vmatprep.mubr.f32.mxu0 0.0
  %3475 = vmatmul.mubr.f32.gmra.mrb[0].mxu0 %v3136
  %v3476 = vpop.f32.mrb[0].mxu0
  %v3477 = vadd.f32 0.0, %v3476
  %v3478 = vpop.f32.mrb[0].mxu0
  %3479 = vmatprep.mubr.f32.mxu0 0.0
  %3480 = vmatmul.mubr.f32.gmra.mrb[0].mxu0 %v3139
  %v3481 = vpop.f32.mrb[0].mxu0
  %v3482 = vadd.f32 0.0, %v3481
  %v3483 = vpop.f32.mrb[0].mxu0
  %3484 = vmatprep.mubr.f32.mxu0 0.0
  %3485 = vmatmul.mubr.f32.gmra.mrb[0].mxu0 %v3142
  %v3486 = vpop.f32.mrb[0].mxu0
  %v3487 = vadd.f32 0.0, %v3486
  %v3488 = vpop.f32.mrb[0].mxu0
  %3489 = vmatprep.mubr.f32.mxu0 0.0
  %3490 = vmatmul.mubr.f32.gmra.mrb[0].mxu0 %v3145
  %v3491 = vpop.f32.mrb[0].mxu0
  %v3492 = vadd.f32 0.0, %v3491
  %v3493 = vpop.f32.mrb[0].mxu0
  %3494 = vmatprep.mubr.f32.mxu0 0.0
  %3495 = vmatmul.mubr.f32.gmra.mrb[0].mxu0 %v3148
  %v3496 = vpop.f32.mrb[0].mxu0
  %v3497 = vadd.f32 0.0, %v3496
  %v3498 = vpop.f32.mrb[0].mxu0
  %3499 = vmatprep.mubr.f32.mxu0 0.0
  %3500 = vmatmul.mubr.f32.gmra.mrb[0].mxu0 %v3151
  %v3501 = vpop.f32.mrb[0].mxu0
  %v3502 = vadd.f32 0.0, %v3501
  %v3503 = vpop.f32.mrb[0].mxu0
  %3504 = vmatprep.mubr.f32.mxu0 0.0
  %3505 = vmatmul.mubr.f32.gmra.mrb[0].mxu0 %v3154
  %v3506 = vpop.f32.mrb[0].mxu0
  %v3507 = vadd.f32 0.0, %v3506
  %v3508 = vpop.f32.mrb[0].mxu0
  %3509 = vmatprep.mubr.f32.mxu0 0.0
  %3510 = vmatmul.mubr.f32.gmra.mrb[0].mxu0 %v3157
  %v3511 = vpop.f32.mrb[0].mxu0
  %v3512 = vadd.f32 0.0, %v3511
  %v3513 = vpop.f32.mrb[0].mxu0
  %3514 = vmatprep.mubr.f32.mxu0 0.0
  %3515 = vmatmul.mubr.f32.gmra.mrb[0].mxu0 %v3160
  %v3516 = vpop.f32.mrb[0].mxu0
  %v3517 = vadd.f32 0.0, %v3516
  %v3518 = vpop.f32.mrb[0].mxu0
  %3519 = vmatprep.mubr.f32.mxu0 0.0
  %3520 = vmatmul.mubr.f32.gmra.mrb[0].mxu0 %v3163
  %v3521 = vpop.f32.mrb[0].mxu0
  %v3522 = vadd.f32 0.0, %v3521
  %v3523 = vpop.f32.mrb[0].mxu0
  %3524 = vmatprep.mubr.f32.mxu0 0.0
  %3525 = vmatmul.mubr.f32.gmra.mrb[0].mxu0 %v3166
  %v3526 = vpop.f32.mrb[0].mxu0
  %v3527 = vadd.f32 0.0, %v3526
  %v3528 = vpop.f32.mrb[0].mxu0
  %3529 = vmatprep.mubr.f32.mxu0 0.0
  %3530 = vmatmul.mubr.f32.gmra.mrb[0].mxu0 %v3169
  %v3531 = vpop.f32.mrb[0].mxu0
  %v3532 = vadd.f32 0.0, %v3531
  %v3533 = vpop.f32.mrb[0].mxu0
  %3534 = vmatprep.mubr.f32.mxu0 0.0
  %3535 = vmatmul.mubr.f32.gmra.mrb[0].mxu0 %v3172
  %v3536 = vpop.f32.mrb[0].mxu0
  %v3537 = vadd.f32 0.0, %v3536
  %v3538 = vpop.f32.mrb[0].mxu0
  %3539 = vmatprep.mubr.f32.mxu0 0.0
  %3540 = vmatmul.mubr.f32.gmra.mrb[0].mxu0 %v3175
  %v3541 = vpop.f32.mrb[0].mxu0
  %v3542 = vadd.f32 0.0, %v3541
  %v3543 = vpop.f32.mrb[0].mxu0
  %3544 = vmatprep.mubr.f32.mxu0 0.0
  %3545 = vmatmul.mubr.f32.gmra.mrb[0].mxu0 %v3178
  %v3546 = vpop.f32.mrb[0].mxu0
  %v3547 = vadd.f32 0.0, %v3546
  %v3548 = vpop.f32.mrb[0].mxu0
  %3549 = vmatprep.mubr.f32.mxu0 0.0
  %3550 = vmatmul.mubr.f32.gmra.mrb[0].mxu0 %v3181
  %v3551 = vpop.f32.mrb[0].mxu0
  %v3552 = vadd.f32 0.0, %v3551
  %v3553 = vpop.f32.mrb[0].mxu0
  %3554 = vmatprep.mubr.f32.mxu0 0.0
  %3555 = vmatmul.mubr.f32.gmra.mrb[0].mxu0 %v3184
  %v3556 = vpop.f32.mrb[0].mxu0
  %v3557 = vadd.f32 0.0, %v3556
  %v3558 = vpop.f32.mrb[0].mxu0
  %3559 = vmatprep.mubr.f32.mxu0 0.0
  %3560 = vmatmul.mubr.f32.gmra.mrb[0].mxu0 %v3187
  %v3561 = vpop.f32.mrb[0].mxu0
  %v3562 = vadd.f32 0.0, %v3561
  %v3563 = vpop.f32.mrb[0].mxu0
  %3564 = vmatprep.mubr.f32.mxu0 0.0
  %3565 = vmatmul.mubr.f32.gmra.mrb[0].mxu0 %v3190
  %v3566 = vpop.f32.mrb[0].mxu0
  %v3567 = vadd.f32 0.0, %v3566
  %v3568 = vpop.f32.mrb[0].mxu0
  %3569 = vmatprep.mubr.f32.mxu0 0.0
  %3570 = vmatmul.mubr.f32.gmra.mrb[0].mxu0 %v3193
  %v3571 = vpop.f32.mrb[0].mxu0
  %v3572 = vadd.f32 0.0, %v3571
  %v3573 = vpop.f32.mrb[0].mxu0
  %3574 = vmatprep.mubr.f32.mxu0 0.0
  %3575 = vmatmul.mubr.f32.gmra.mrb[0].mxu0 %v3196
  %v3576 = vpop.f32.mrb[0].mxu0
  %v3577 = vadd.f32 0.0, %v3576
  %v3578 = vpop.f32.mrb[0].mxu0
  %3579 = vmatprep.mubr.f32.mxu0 0.0
  %3580 = vmatmul.mubr.f32.gmra.mrb[0].mxu0 %v3199
  %v3581 = vpop.f32.mrb[0].mxu0
  %v3582 = vadd.f32 0.0, %v3581
  %v3583 = vpop.f32.mrb[0].mxu0
  %3584 = vmatprep.mubr.f32.mxu0 0.0
  %3585 = vmatmul.mubr.f32.gmra.mrb[0].mxu0 %v3202
  %v3586 = vpop.f32.mrb[0].mxu0
  %v3587 = vadd.f32 0.0, %v3586
  %v3588 = vpop.f32.mrb[0].mxu0
  %3589 = vmatprep.mubr.f32.mxu0 0.0
  %3590 = vmatmul.mubr.f32.gmra.mrb[0].mxu0 %v3205
  %v3591 = vpop.f32.mrb[0].mxu0
  %v3592 = vadd.f32 0.0, %v3591
  %v3593 = vpop.f32.mrb[0].mxu0
  %3594 = vdwg.mxu0
  %v3595 = vadd.f32 %v2885, %v3277
  %v3596 = vadd.f32 %v2886, %v3282
  %v3597 = vadd.f32 %v2887, %v3287
  %v3598 = vadd.f32 %v2888, %v3292
  %v3599 = vadd.f32 %v2889, %v3297
  %v3600 = vadd.f32 %v2890, %v3302
  %v3601 = vadd.f32 %v2891, %v3307
  %v3602 = vadd.f32 %v2892, %v3312
  %v3603 = vadd.f32 %v2893, %v3317
  %v3604 = vadd.f32 %v2894, %v3322
  %v3605 = vadd.f32 %v2895, %v3327
  %v3606 = vadd.f32 %v2896, %v3332
  %v3607 = vadd.f32 %v2897, %v3337
  %v3608 = vadd.f32 %v2898, %v3342
  %v3609 = vadd.f32 %v2899, %v3347
  %v3610 = vadd.f32 %v2900, %v3352
  %v3611 = vadd.f32 %v2901, %v3357
  %v3612 = vadd.f32 %v2902, %v3362
  %v3613 = vadd.f32 %v2903, %v3367
  %v3614 = vadd.f32 %v2904, %v3372
  %v3615 = vadd.f32 %v2905, %v3377
  %v3616 = vadd.f32 %v2906, %v3382
  %v3617 = vadd.f32 %v2907, %v3387
  %v3618 = vadd.f32 %v2908, %v3392
  %v3619 = vadd.f32 %v2909, %v3397
  %v3620 = vadd.f32 %v2910, %v3402
  %v3621 = vadd.f32 %v2911, %v3407
  %v3622 = vadd.f32 %v2912, %v3412
  %v3623 = vadd.f32 %v2913, %v3417
  %v3624 = vadd.f32 %v2914, %v3422
  %v3625 = vadd.f32 %v2915, %v3427
  %v3626 = vadd.f32 %v2916, %v3432
  %v3627 = vadd.f32 %v2917, %v3437
  %v3628 = vadd.f32 %v2918, %v3442
  %v3629 = vadd.f32 %v2919, %v3447
  %v3630 = vadd.f32 %v2920, %v3452
  %v3631 = vadd.f32 %v2921, %v3457
  %v3632 = vadd.f32 %v2922, %v3462
  %v3633 = vadd.f32 %v2923, %v3467
  %v3634 = vadd.f32 %v2924, %v3472
  %v3635 = vadd.f32 %v2925, %v3477
  %v3636 = vadd.f32 %v2926, %v3482
  %v3637 = vadd.f32 %v2927, %v3487
  %v3638 = vadd.f32 %v2928, %v3492
  %v3639 = vadd.f32 %v2929, %v3497
  %v3640 = vadd.f32 %v2930, %v3502
  %v3641 = vadd.f32 %v2931, %v3507
  %v3642 = vadd.f32 %v2932, %v3512
  %v3643 = vadd.f32 %v2933, %v3517
  %v3644 = vadd.f32 %v2934, %v3522
  %v3645 = vadd.f32 %v2935, %v3527
  %v3646 = vadd.f32 %v2936, %v3532
  %v3647 = vadd.f32 %v2937, %v3537
  %v3648 = vadd.f32 %v2938, %v3542
  %v3649 = vadd.f32 %v2939, %v3547
  %v3650 = vadd.f32 %v2940, %v3552
  %v3651 = vadd.f32 %v2941, %v3557
  %v3652 = vadd.f32 %v2942, %v3562
  %v3653 = vadd.f32 %v2943, %v3567
  %v3654 = vadd.f32 %v2944, %v3572
  %v3655 = vadd.f32 %v2945, %v3577
  %v3656 = vadd.f32 %v2946, %v3582
  %v3657 = vadd.f32 %v2947, %v3587
  %v3658 = vadd.f32 %v2948, %v3592
  %v3659 = vld [vmem:[%s105 + $0x2] sm:$0xff]
  %v3660 = vld [vmem:[%s105 + $0xa] sm:$0xff]
  %v3661 = vld [vmem:[%s105 + $0x1a] sm:$0xff]
  %v3662 = vld [vmem:[%s105 + $0x22] sm:$0xff]
  %v3663 = vld [vmem:[%s105 + $0x32] sm:$0xff]
  %v3664 = vld [vmem:[%s105 + $0x3a] sm:$0xff]
  %v3665 = vld [vmem:[%s105 + $0x4a] sm:$0xff]
  %v3666 = vld [vmem:[%s105 + $0x52] sm:$0xff]
  %v3667 = vld [vmem:[%s105 + $0x62] sm:$0xff]
  %v3668 = vld [vmem:[%s105 + $0x6a] sm:$0xff]
  %v3669 = vld [vmem:[%s105 + $0x7a] sm:$0xff]
  %v3670 = vld [vmem:[%s105 + $0x82] sm:$0xff]
  %v3671 = vld [vmem:[%s105 + $0x92] sm:$0xff]
  %v3672 = vld [vmem:[%s105 + $0x9a] sm:$0xff]
  %v3673 = vld [vmem:[%s105 + $0xaa] sm:$0xff]
  %v3674 = vld [vmem:[%s105 + $0xb2] sm:$0xff]
  %v3675 = vld [vmem:[%s105 + $0xc2] sm:$0xff]
  %v3676 = vld [vmem:[%s105 + $0xca] sm:$0xff]
  %v3677 = vld [vmem:[%s105 + $0xda] sm:$0xff]
  %v3678 = vld [vmem:[%s105 + $0xe2] sm:$0xff]
  %v3679 = vld [vmem:[%s105 + $0xf2] sm:$0xff]
  %v3680 = vld [vmem:[%s105 + $0xfa] sm:$0xff]
  %v3681 = vld [vmem:[%s105 + $0x10a] sm:$0xff]
  %v3682 = vld [vmem:[%s105 + $0x112] sm:$0xff]
  %v3683 = vld [vmem:[%s105 + $0x122] sm:$0xff]
  %v3684 = vld [vmem:[%s105 + $0x12a] sm:$0xff]
  %v3685 = vld [vmem:[%s105 + $0x13a] sm:$0xff]
  %v3686 = vld [vmem:[%s105 + $0x142] sm:$0xff]
  %v3687 = vld [vmem:[%s105 + $0x152] sm:$0xff]
  %v3688 = vld [vmem:[%s105 + $0x15a] sm:$0xff]
  %v3689 = vld [vmem:[%s105 + $0x16a] sm:$0xff]
  %v3690 = vld [vmem:[%s105 + $0x172] sm:$0xff]
  %v3691 = vld [vmem:[%s105 + $0x1b2] sm:$0xff]
  %v3692 = vld [vmem:[%s105 + $0x1ba] sm:$0xff]
  %v3693 = vld [vmem:[%s105 + $0x1ca] sm:$0xff]
  %v3694 = vld [vmem:[%s105 + $0x1d2] sm:$0xff]
  %v3695 = vld [vmem:[%s105 + $0x1e2] sm:$0xff]
  %v3696 = vld [vmem:[%s105 + $0x1ea] sm:$0xff]
  %v3697 = vld [vmem:[%s105 + $0x1fa] sm:$0xff]
  %v3698 = vld [vmem:[%s105 + $0x202] sm:$0xff]
  %v3699 = vld [vmem:[%s105 + $0x212] sm:$0xff]
  %v3700 = vld [vmem:[%s105 + $0x21a] sm:$0xff]
  %v3701 = vld [vmem:[%s105 + $0x22a] sm:$0xff]
  %v3702 = vld [vmem:[%s105 + $0x232] sm:$0xff]
  %v3703 = vld [vmem:[%s105 + $0x242] sm:$0xff]
  %v3704 = vld [vmem:[%s105 + $0x24a] sm:$0xff]
  %v3705 = vld [vmem:[%s105 + $0x25a] sm:$0xff]
  %v3706 = vld [vmem:[%s105 + $0x262] sm:$0xff]
  %v3707 = vld [vmem:[%s105 + $0x272] sm:$0xff]
  %v3708 = vld [vmem:[%s105 + $0x27a] sm:$0xff]
  %v3709 = vld [vmem:[%s105 + $0x28a] sm:$0xff]
  %v3710 = vld [vmem:[%s105 + $0x292] sm:$0xff]
  %v3711 = vld [vmem:[%s105 + $0x2a2] sm:$0xff]
  %v3712 = vld [vmem:[%s105 + $0x2aa] sm:$0xff]
  %v3713 = vld [vmem:[%s105 + $0x2ba] sm:$0xff]
  %v3714 = vld [vmem:[%s105 + $0x2c2] sm:$0xff]
  %v3715 = vld [vmem:[%s105 + $0x2d2] sm:$0xff]
  %v3716 = vld [vmem:[%s105 + $0x2da] sm:$0xff]
  %v3717 = vld [vmem:[%s105 + $0x2ea] sm:$0xff]
  %v3718 = vld [vmem:[%s105 + $0x2f2] sm:$0xff]
  %v3719 = vld [vmem:[%s105 + $0x302] sm:$0xff]
  %v3720 = vld [vmem:[%s105 + $0x30a] sm:$0xff]
  %v3721 = vld [vmem:[%s105 + $0x31a] sm:$0xff]
  %v3722 = vld [vmem:[%s105 + $0x322] sm:$0xff]
  %s3723 = scalar_lea.vmem %s1, 20
  %v3724 = vld [vmem:[%s3723] sm:$0xf]
  %v3726 = vsel %vm90, %v3659, 0
  %v3729 = vsel %vm90, %v3660, 0
  %v3732 = vsel %vm90, %v3661, 0
  %v3735 = vsel %vm90, %v3662, 0
  %v3738 = vsel %vm90, %v3663, 0
  %v3741 = vsel %vm90, %v3664, 0
  %v3744 = vsel %vm90, %v3665, 0
  %v3747 = vsel %vm90, %v3666, 0
  %v3750 = vsel %vm90, %v3667, 0
  %v3753 = vsel %vm90, %v3668, 0
  %v3756 = vsel %vm90, %v3669, 0
  %v3759 = vsel %vm90, %v3670, 0
  %v3762 = vsel %vm90, %v3671, 0
  %v3765 = vsel %vm90, %v3672, 0
  %v3768 = vsel %vm90, %v3673, 0
  %v3771 = vsel %vm90, %v3674, 0
  %v3774 = vsel %vm90, %v3675, 0
  %v3777 = vsel %vm90, %v3676, 0
  %v3780 = vsel %vm90, %v3677, 0
  %v3783 = vsel %vm90, %v3678, 0
  %v3786 = vsel %vm90, %v3679, 0
  %v3789 = vsel %vm90, %v3680, 0
  %v3792 = vsel %vm90, %v3681, 0
  %v3795 = vsel %vm90, %v3682, 0
  %v3798 = vsel %vm90, %v3683, 0
  %v3801 = vsel %vm90, %v3684, 0
  %v3804 = vsel %vm90, %v3685, 0
  %v3807 = vsel %vm90, %v3686, 0
  %v3810 = vsel %vm90, %v3687, 0
  %v3813 = vsel %vm90, %v3688, 0
  %v3816 = vsel %vm90, %v3689, 0
  %v3819 = vsel %vm90, %v3690, 0
  %v3822 = vsel %vm90, %v3691, 0
  %v3825 = vsel %vm90, %v3692, 0
  %v3828 = vsel %vm90, %v3693, 0
  %v3831 = vsel %vm90, %v3694, 0
  %v3834 = vsel %vm90, %v3695, 0
  %v3837 = vsel %vm90, %v3696, 0
  %v3840 = vsel %vm90, %v3697, 0
  %v3843 = vsel %vm90, %v3698, 0
  %v3846 = vsel %vm90, %v3699, 0
  %v3849 = vsel %vm90, %v3700, 0
  %v3852 = vsel %vm90, %v3701, 0
  %v3855 = vsel %vm90, %v3702, 0
  %v3858 = vsel %vm90, %v3703, 0
  %v3861 = vsel %vm90, %v3704, 0
  %v3864 = vsel %vm90, %v3705, 0
  %v3867 = vsel %vm90, %v3706, 0
  %v3870 = vsel %vm90, %v3707, 0
  %v3873 = vsel %vm90, %v3708, 0
  %v3876 = vsel %vm90, %v3709, 0
  %v3879 = vsel %vm90, %v3710, 0
  %v3882 = vsel %vm90, %v3711, 0
  %v3885 = vsel %vm90, %v3712, 0
  %v3888 = vsel %vm90, %v3713, 0
  %v3891 = vsel %vm90, %v3714, 0
  %v3894 = vsel %vm90, %v3715, 0
  %v3897 = vsel %vm90, %v3716, 0
  %v3900 = vsel %vm90, %v3717, 0
  %v3903 = vsel %vm90, %v3718, 0
  %v3906 = vsel %vm90, %v3719, 0
  %v3909 = vsel %vm90, %v3720, 0
  %v3912 = vsel %vm90, %v3721, 0
  %v3915 = vsel %vm90, %v3722, 0
  %v3918 = vsel %vm560, %v3724, 0
  %3920 = vmatprep.subr.mxu0 0.0
  %3921 = vmatpush1.msra.mxu0 %v3918
  %3922 = vmatprep.subr.mxu0 0.0
  %3923 = vmatpush1.msra.mxu0 0.0
  %3924 = vmatprep.subr.mxu0 0.0
  %3925 = vmatpush1.msra.mxu0 0.0
  %3926 = vmatprep.subr.mxu0 0.0
  %3927 = vmatpush1.msra.mxu0 0.0
  %3928 = vmatprep.subr.mxu0 0.0
  %3929 = vmatpush1.msra.mxu0 0.0
  %3930 = vmatprep.subr.mxu0 0.0
  %3931 = vmatpush1.msra.mxu0 0.0
  %3932 = vmatprep.subr.mxu0 0.0
  %3933 = vmatpush1.msra.mxu0 0.0
  %3934 = vmatprep.subr.mxu0 0.0
  %3935 = vmatpush1.msra.mxu0 0.0
  %3936 = vmatprep.subr.mxu0 0.0
  %3937 = vmatpush1.msra.mxu0 0.0
  %3938 = vmatprep.subr.mxu0 0.0
  %3939 = vmatpush1.msra.mxu0 0.0
  %3940 = vmatprep.subr.mxu0 0.0
  %3941 = vmatpush1.msra.mxu0 0.0
  %3942 = vmatprep.subr.mxu0 0.0
  %3943 = vmatpush1.msra.mxu0 0.0
  %3944 = vmatprep.subr.mxu0 0.0
  %3945 = vmatpush1.msra.mxu0 0.0
  %3946 = vmatprep.subr.mxu0 0.0
  %3947 = vmatpush1.msra.mxu0 0.0
  %3948 = vmatprep.subr.mxu0 0.0
  %3949 = vmatpush1.msra.mxu0 0.0
  %3950 = vmatprep.subr.mxu0 0.0
  %3951 = vmatpush1.msra.mxu0 0.0
  %3952 = vmatprep.subr.mxu0 0.0
  %3953 = vmatpush1.msra.mxu0 0.0
  %3954 = vmatprep.subr.mxu0 0.0
  %3955 = vmatpush1.msra.mxu0 0.0
  %3956 = vmatprep.subr.mxu0 0.0
  %3957 = vmatpush1.msra.mxu0 0.0
  %3958 = vmatprep.subr.mxu0 0.0
  %3959 = vmatpush1.msra.mxu0 0.0
  %3960 = vmatprep.subr.mxu0 0.0
  %3961 = vmatpush1.msra.mxu0 0.0
  %3962 = vmatprep.subr.mxu0 0.0
  %3963 = vmatpush1.msra.mxu0 0.0
  %3964 = vmatprep.subr.mxu0 0.0
  %3965 = vmatpush1.msra.mxu0 0.0
  %3966 = vmatprep.subr.mxu0 0.0
  %3967 = vmatpush1.msra.mxu0 0.0
  %3968 = vmatprep.subr.mxu0 0.0
  %3969 = vmatpush1.msra.mxu0 0.0
  %3970 = vmatprep.subr.mxu0 0.0
  %3971 = vmatpush1.msra.mxu0 0.0
  %3972 = vmatprep.subr.mxu0 0.0
  %3973 = vmatpush1.msra.mxu0 0.0
  %3974 = vmatprep.subr.mxu0 0.0
  %3975 = vmatpush1.msra.mxu0 0.0
  %3976 = vmatprep.subr.mxu0 0.0
  %3977 = vmatpush1.msra.mxu0 0.0
  %3978 = vmatprep.subr.mxu0 0.0
  %3979 = vmatpush1.msra.mxu0 0.0
  %3980 = vmatprep.subr.mxu0 0.0
  %3981 = vmatpush1.msra.mxu0 0.0
  %3982 = vmatprep.subr.mxu0 0.0
  %3983 = vmatpush1.msra.mxu0 0.0
  %3984 = vmatprep.mubr.f32.mxu0 0.0
  %3985 = vmatmul.mubr.f32.gmra.mrb[0].mxu0 %v3726
  %v3986 = vpop.f32.mrb[0].mxu0
  %v3987 = vadd.f32 0.0, %v3986
  %v3988 = vpop.f32.mrb[0].mxu0
  %3989 = vmatprep.mubr.f32.mxu0 0.0
  %3990 = vmatmul.mubr.f32.gmra.mrb[0].mxu0 %v3729
  %v3991 = vpop.f32.mrb[0].mxu0
  %v3992 = vadd.f32 0.0, %v3991
  %v3993 = vpop.f32.mrb[0].mxu0
  %3994 = vmatprep.mubr.f32.mxu0 0.0
  %3995 = vmatmul.mubr.f32.gmra.mrb[0].mxu0 %v3732
  %v3996 = vpop.f32.mrb[0].mxu0
  %v3997 = vadd.f32 0.0, %v3996
  %v3998 = vpop.f32.mrb[0].mxu0
  %3999 = vmatprep.mubr.f32.mxu0 0.0
  %4000 = vmatmul.mubr.f32.gmra.mrb[0].mxu0 %v3735
  %v4001 = vpop.f32.mrb[0].mxu0
  %v4002 = vadd.f32 0.0, %v4001
  %v4003 = vpop.f32.mrb[0].mxu0
  %4004 = vmatprep.mubr.f32.mxu0 0.0
  %4005 = vmatmul.mubr.f32.gmra.mrb[0].mxu0 %v3738
  %v4006 = vpop.f32.mrb[0].mxu0
  %v4007 = vadd.f32 0.0, %v4006
  %v4008 = vpop.f32.mrb[0].mxu0
  %4009 = vmatprep.mubr.f32.mxu0 0.0
  %4010 = vmatmul.mubr.f32.gmra.mrb[0].mxu0 %v3741
  %v4011 = vpop.f32.mrb[0].mxu0
  %v4012 = vadd.f32 0.0, %v4011
  %v4013 = vpop.f32.mrb[0].mxu0
  %4014 = vmatprep.mubr.f32.mxu0 0.0
  %4015 = vmatmul.mubr.f32.gmra.mrb[0].mxu0 %v3744
  %v4016 = vpop.f32.mrb[0].mxu0
  %v4017 = vadd.f32 0.0, %v4016
  %v4018 = vpop.f32.mrb[0].mxu0
  %4019 = vmatprep.mubr.f32.mxu0 0.0
  %4020 = vmatmul.mubr.f32.gmra.mrb[0].mxu0 %v3747
  %v4021 = vpop.f32.mrb[0].mxu0
  %v4022 = vadd.f32 0.0, %v4021
  %v4023 = vpop.f32.mrb[0].mxu0
  %4024 = vmatprep.mubr.f32.mxu0 0.0
  %4025 = vmatmul.mubr.f32.gmra.mrb[0].mxu0 %v3750
  %v4026 = vpop.f32.mrb[0].mxu0
  %v4027 = vadd.f32 0.0, %v4026
  %v4028 = vpop.f32.mrb[0].mxu0
  %4029 = vmatprep.mubr.f32.mxu0 0.0
  %4030 = vmatmul.mubr.f32.gmra.mrb[0].mxu0 %v3753
  %v4031 = vpop.f32.mrb[0].mxu0
  %v4032 = vadd.f32 0.0, %v4031
  %v4033 = vpop.f32.mrb[0].mxu0
  %4034 = vmatprep.mubr.f32.mxu0 0.0
  %4035 = vmatmul.mubr.f32.gmra.mrb[0].mxu0 %v3756
  %v4036 = vpop.f32.mrb[0].mxu0
  %v4037 = vadd.f32 0.0, %v4036
  %v4038 = vpop.f32.mrb[0].mxu0
  %4039 = vmatprep.mubr.f32.mxu0 0.0
  %4040 = vmatmul.mubr.f32.gmra.mrb[0].mxu0 %v3759
  %v4041 = vpop.f32.mrb[0].mxu0
  %v4042 = vadd.f32 0.0, %v4041
  %v4043 = vpop.f32.mrb[0].mxu0
  %4044 = vmatprep.mubr.f32.mxu0 0.0
  %4045 = vmatmul.mubr.f32.gmra.mrb[0].mxu0 %v3762
  %v4046 = vpop.f32.mrb[0].mxu0
  %v4047 = vadd.f32 0.0, %v4046
  %v4048 = vpop.f32.mrb[0].mxu0
  %4049 = vmatprep.mubr.f32.mxu0 0.0
  %4050 = vmatmul.mubr.f32.gmra.mrb[0].mxu0 %v3765
  %v4051 = vpop.f32.mrb[0].mxu0
  %v4052 = vadd.f32 0.0, %v4051
  %v4053 = vpop.f32.mrb[0].mxu0
  %4054 = vmatprep.mubr.f32.mxu0 0.0
  %4055 = vmatmul.mubr.f32.gmra.mrb[0].mxu0 %v3768
  %v4056 = vpop.f32.mrb[0].mxu0
  %v4057 = vadd.f32 0.0, %v4056
  %v4058 = vpop.f32.mrb[0].mxu0
  %4059 = vmatprep.mubr.f32.mxu0 0.0
  %4060 = vmatmul.mubr.f32.gmra.mrb[0].mxu0 %v3771
  %v4061 = vpop.f32.mrb[0].mxu0
  %v4062 = vadd.f32 0.0, %v4061
  %v4063 = vpop.f32.mrb[0].mxu0
  %4064 = vmatprep.mubr.f32.mxu0 0.0
  %4065 = vmatmul.mubr.f32.gmra.mrb[0].mxu0 %v3774
  %v4066 = vpop.f32.mrb[0].mxu0
  %v4067 = vadd.f32 0.0, %v4066
  %v4068 = vpop.f32.mrb[0].mxu0
  %4069 = vmatprep.mubr.f32.mxu0 0.0
  %4070 = vmatmul.mubr.f32.gmra.mrb[0].mxu0 %v3777
  %v4071 = vpop.f32.mrb[0].mxu0
  %v4072 = vadd.f32 0.0, %v4071
  %v4073 = vpop.f32.mrb[0].mxu0
  %4074 = vmatprep.mubr.f32.mxu0 0.0
  %4075 = vmatmul.mubr.f32.gmra.mrb[0].mxu0 %v3780
  %v4076 = vpop.f32.mrb[0].mxu0
  %v4077 = vadd.f32 0.0, %v4076
  %v4078 = vpop.f32.mrb[0].mxu0
  %4079 = vmatprep.mubr.f32.mxu0 0.0
  %4080 = vmatmul.mubr.f32.gmra.mrb[0].mxu0 %v3783
  %v4081 = vpop.f32.mrb[0].mxu0
  %v4082 = vadd.f32 0.0, %v4081
  %v4083 = vpop.f32.mrb[0].mxu0
  %4084 = vmatprep.mubr.f32.mxu0 0.0
  %4085 = vmatmul.mubr.f32.gmra.mrb[0].mxu0 %v3786
  %v4086 = vpop.f32.mrb[0].mxu0
  %v4087 = vadd.f32 0.0, %v4086
  %v4088 = vpop.f32.mrb[0].mxu0
  %4089 = vmatprep.mubr.f32.mxu0 0.0
  %4090 = vmatmul.mubr.f32.gmra.mrb[0].mxu0 %v3789
  %v4091 = vpop.f32.mrb[0].mxu0
  %v4092 = vadd.f32 0.0, %v4091
  %v4093 = vpop.f32.mrb[0].mxu0
  %4094 = vmatprep.mubr.f32.mxu0 0.0
  %4095 = vmatmul.mubr.f32.gmra.mrb[0].mxu0 %v3792
  %v4096 = vpop.f32.mrb[0].mxu0
  %v4097 = vadd.f32 0.0, %v4096
  %v4098 = vpop.f32.mrb[0].mxu0
  %4099 = vmatprep.mubr.f32.mxu0 0.0
  %4100 = vmatmul.mubr.f32.gmra.mrb[0].mxu0 %v3795
  %v4101 = vpop.f32.mrb[0].mxu0
  %v4102 = vadd.f32 0.0, %v4101
  %v4103 = vpop.f32.mrb[0].mxu0
  %4104 = vmatprep.mubr.f32.mxu0 0.0
  %4105 = vmatmul.mubr.f32.gmra.mrb[0].mxu0 %v3798
  %v4106 = vpop.f32.mrb[0].mxu0
  %v4107 = vadd.f32 0.0, %v4106
  %v4108 = vpop.f32.mrb[0].mxu0
  %4109 = vmatprep.mubr.f32.mxu0 0.0
  %4110 = vmatmul.mubr.f32.gmra.mrb[0].mxu0 %v3801
  %v4111 = vpop.f32.mrb[0].mxu0
  %v4112 = vadd.f32 0.0, %v4111
  %v4113 = vpop.f32.mrb[0].mxu0
  %4114 = vmatprep.mubr.f32.mxu0 0.0
  %4115 = vmatmul.mubr.f32.gmra.mrb[0].mxu0 %v3804
  %v4116 = vpop.f32.mrb[0].mxu0
  %v4117 = vadd.f32 0.0, %v4116
  %v4118 = vpop.f32.mrb[0].mxu0
  %4119 = vmatprep.mubr.f32.mxu0 0.0
  %4120 = vmatmul.mubr.f32.gmra.mrb[0].mxu0 %v3807
  %v4121 = vpop.f32.mrb[0].mxu0
  %v4122 = vadd.f32 0.0, %v4121
  %v4123 = vpop.f32.mrb[0].mxu0
  %4124 = vmatprep.mubr.f32.mxu0 0.0
  %4125 = vmatmul.mubr.f32.gmra.mrb[0].mxu0 %v3810
  %v4126 = vpop.f32.mrb[0].mxu0
  %v4127 = vadd.f32 0.0, %v4126
  %v4128 = vpop.f32.mrb[0].mxu0
  %4129 = vmatprep.mubr.f32.mxu0 0.0
  %4130 = vmatmul.mubr.f32.gmra.mrb[0].mxu0 %v3813
  %v4131 = vpop.f32.mrb[0].mxu0
  %v4132 = vadd.f32 0.0, %v4131
  %v4133 = vpop.f32.mrb[0].mxu0
  %4134 = vmatprep.mubr.f32.mxu0 0.0
  %4135 = vmatmul.mubr.f32.gmra.mrb[0].mxu0 %v3816
  %v4136 = vpop.f32.mrb[0].mxu0
  %v4137 = vadd.f32 0.0, %v4136
  %v4138 = vpop.f32.mrb[0].mxu0
  %4139 = vmatprep.mubr.f32.mxu0 0.0
  %4140 = vmatmul.mubr.f32.gmra.mrb[0].mxu0 %v3819
  %v4141 = vpop.f32.mrb[0].mxu0
  %v4142 = vadd.f32 0.0, %v4141
  %v4143 = vpop.f32.mrb[0].mxu0
  %4144 = vmatprep.mubr.f32.mxu0 0.0
  %4145 = vmatmul.mubr.f32.gmra.mrb[0].mxu0 %v3822
  %v4146 = vpop.f32.mrb[0].mxu0
  %v4147 = vadd.f32 0.0, %v4146
  %v4148 = vpop.f32.mrb[0].mxu0
  %4149 = vmatprep.mubr.f32.mxu0 0.0
  %4150 = vmatmul.mubr.f32.gmra.mrb[0].mxu0 %v3825
  %v4151 = vpop.f32.mrb[0].mxu0
  %v4152 = vadd.f32 0.0, %v4151
  %v4153 = vpop.f32.mrb[0].mxu0
  %4154 = vmatprep.mubr.f32.mxu0 0.0
  %4155 = vmatmul.mubr.f32.gmra.mrb[0].mxu0 %v3828
  %v4156 = vpop.f32.mrb[0].mxu0
  %v4157 = vadd.f32 0.0, %v4156
  %v4158 = vpop.f32.mrb[0].mxu0
  %4159 = vmatprep.mubr.f32.mxu0 0.0
  %4160 = vmatmul.mubr.f32.gmra.mrb[0].mxu0 %v3831
  %v4161 = vpop.f32.mrb[0].mxu0
  %v4162 = vadd.f32 0.0, %v4161
  %v4163 = vpop.f32.mrb[0].mxu0
  %4164 = vmatprep.mubr.f32.mxu0 0.0
  %4165 = vmatmul.mubr.f32.gmra.mrb[0].mxu0 %v3834
  %v4166 = vpop.f32.mrb[0].mxu0
  %v4167 = vadd.f32 0.0, %v4166
  %v4168 = vpop.f32.mrb[0].mxu0
  %4169 = vmatprep.mubr.f32.mxu0 0.0
  %4170 = vmatmul.mubr.f32.gmra.mrb[0].mxu0 %v3837
  %v4171 = vpop.f32.mrb[0].mxu0
  %v4172 = vadd.f32 0.0, %v4171
  %v4173 = vpop.f32.mrb[0].mxu0
  %4174 = vmatprep.mubr.f32.mxu0 0.0
  %4175 = vmatmul.mubr.f32.gmra.mrb[0].mxu0 %v3840
  %v4176 = vpop.f32.mrb[0].mxu0
  %v4177 = vadd.f32 0.0, %v4176
  %v4178 = vpop.f32.mrb[0].mxu0
  %4179 = vmatprep.mubr.f32.mxu0 0.0
  %4180 = vmatmul.mubr.f32.gmra.mrb[0].mxu0 %v3843
  %v4181 = vpop.f32.mrb[0].mxu0
  %v4182 = vadd.f32 0.0, %v4181
  %v4183 = vpop.f32.mrb[0].mxu0
  %4184 = vmatprep.mubr.f32.mxu0 0.0
  %4185 = vmatmul.mubr.f32.gmra.mrb[0].mxu0 %v3846
  %v4186 = vpop.f32.mrb[0].mxu0
  %v4187 = vadd.f32 0.0, %v4186
  %v4188 = vpop.f32.mrb[0].mxu0
  %4189 = vmatprep.mubr.f32.mxu0 0.0
  %4190 = vmatmul.mubr.f32.gmra.mrb[0].mxu0 %v3849
  %v4191 = vpop.f32.mrb[0].mxu0
  %v4192 = vadd.f32 0.0, %v4191
  %v4193 = vpop.f32.mrb[0].mxu0
  %4194 = vmatprep.mubr.f32.mxu0 0.0
  %4195 = vmatmul.mubr.f32.gmra.mrb[0].mxu0 %v3852
  %v4196 = vpop.f32.mrb[0].mxu0
  %v4197 = vadd.f32 0.0, %v4196
  %v4198 = vpop.f32.mrb[0].mxu0
  %4199 = vmatprep.mubr.f32.mxu0 0.0
  %4200 = vmatmul.mubr.f32.gmra.mrb[0].mxu0 %v3855
  %v4201 = vpop.f32.mrb[0].mxu0
  %v4202 = vadd.f32 0.0, %v4201
  %v4203 = vpop.f32.mrb[0].mxu0
  %4204 = vmatprep.mubr.f32.mxu0 0.0
  %4205 = vmatmul.mubr.f32.gmra.mrb[0].mxu0 %v3858
  %v4206 = vpop.f32.mrb[0].mxu0
  %v4207 = vadd.f32 0.0, %v4206
  %v4208 = vpop.f32.mrb[0].mxu0
  %4209 = vmatprep.mubr.f32.mxu0 0.0
  %4210 = vmatmul.mubr.f32.gmra.mrb[0].mxu0 %v3861
  %v4211 = vpop.f32.mrb[0].mxu0
  %v4212 = vadd.f32 0.0, %v4211
  %v4213 = vpop.f32.mrb[0].mxu0
  %4214 = vmatprep.mubr.f32.mxu0 0.0
  %4215 = vmatmul.mubr.f32.gmra.mrb[0].mxu0 %v3864
  %v4216 = vpop.f32.mrb[0].mxu0
  %v4217 = vadd.f32 0.0, %v4216
  %v4218 = vpop.f32.mrb[0].mxu0
  %4219 = vmatprep.mubr.f32.mxu0 0.0
  %4220 = vmatmul.mubr.f32.gmra.mrb[0].mxu0 %v3867
  %v4221 = vpop.f32.mrb[0].mxu0
  %v4222 = vadd.f32 0.0, %v4221
  %v4223 = vpop.f32.mrb[0].mxu0
  %4224 = vmatprep.mubr.f32.mxu0 0.0
  %4225 = vmatmul.mubr.f32.gmra.mrb[0].mxu0 %v3870
  %v4226 = vpop.f32.mrb[0].mxu0
  %v4227 = vadd.f32 0.0, %v4226
  %v4228 = vpop.f32.mrb[0].mxu0
  %4229 = vmatprep.mubr.f32.mxu0 0.0
  %4230 = vmatmul.mubr.f32.gmra.mrb[0].mxu0 %v3873
  %v4231 = vpop.f32.mrb[0].mxu0
  %v4232 = vadd.f32 0.0, %v4231
  %v4233 = vpop.f32.mrb[0].mxu0
  %4234 = vmatprep.mubr.f32.mxu0 0.0
  %4235 = vmatmul.mubr.f32.gmra.mrb[0].mxu0 %v3876
  %v4236 = vpop.f32.mrb[0].mxu0
  %v4237 = vadd.f32 0.0, %v4236
  %v4238 = vpop.f32.mrb[0].mxu0
  %4239 = vmatprep.mubr.f32.mxu0 0.0
  %4240 = vmatmul.mubr.f32.gmra.mrb[0].mxu0 %v3879
  %v4241 = vpop.f32.mrb[0].mxu0
  %v4242 = vadd.f32 0.0, %v4241
  %v4243 = vpop.f32.mrb[0].mxu0
  %4244 = vmatprep.mubr.f32.mxu0 0.0
  %4245 = vmatmul.mubr.f32.gmra.mrb[0].mxu0 %v3882
  %v4246 = vpop.f32.mrb[0].mxu0
  %v4247 = vadd.f32 0.0, %v4246
  %v4248 = vpop.f32.mrb[0].mxu0
  %4249 = vmatprep.mubr.f32.mxu0 0.0
  %4250 = vmatmul.mubr.f32.gmra.mrb[0].mxu0 %v3885
  %v4251 = vpop.f32.mrb[0].mxu0
  %v4252 = vadd.f32 0.0, %v4251
  %v4253 = vpop.f32.mrb[0].mxu0
  %4254 = vmatprep.mubr.f32.mxu0 0.0
  %4255 = vmatmul.mubr.f32.gmra.mrb[0].mxu0 %v3888
  %v4256 = vpop.f32.mrb[0].mxu0
  %v4257 = vadd.f32 0.0, %v4256
  %v4258 = vpop.f32.mrb[0].mxu0
  %4259 = vmatprep.mubr.f32.mxu0 0.0
  %4260 = vmatmul.mubr.f32.gmra.mrb[0].mxu0 %v3891
  %v4261 = vpop.f32.mrb[0].mxu0
  %v4262 = vadd.f32 0.0, %v4261
  %v4263 = vpop.f32.mrb[0].mxu0
  %4264 = vmatprep.mubr.f32.mxu0 0.0
  %4265 = vmatmul.mubr.f32.gmra.mrb[0].mxu0 %v3894
  %v4266 = vpop.f32.mrb[0].mxu0
  %v4267 = vadd.f32 0.0, %v4266
  %v4268 = vpop.f32.mrb[0].mxu0
  %4269 = vmatprep.mubr.f32.mxu0 0.0
  %4270 = vmatmul.mubr.f32.gmra.mrb[0].mxu0 %v3897
  %v4271 = vpop.f32.mrb[0].mxu0
  %v4272 = vadd.f32 0.0, %v4271
  %v4273 = vpop.f32.mrb[0].mxu0
  %4274 = vmatprep.mubr.f32.mxu0 0.0
  %4275 = vmatmul.mubr.f32.gmra.mrb[0].mxu0 %v3900
  %v4276 = vpop.f32.mrb[0].mxu0
  %v4277 = vadd.f32 0.0, %v4276
  %v4278 = vpop.f32.mrb[0].mxu0
  %4279 = vmatprep.mubr.f32.mxu0 0.0
  %4280 = vmatmul.mubr.f32.gmra.mrb[0].mxu0 %v3903
  %v4281 = vpop.f32.mrb[0].mxu0
  %v4282 = vadd.f32 0.0, %v4281
  %v4283 = vpop.f32.mrb[0].mxu0
  %4284 = vmatprep.mubr.f32.mxu0 0.0
  %4285 = vmatmul.mubr.f32.gmra.mrb[0].mxu0 %v3906
  %v4286 = vpop.f32.mrb[0].mxu0
  %v4287 = vadd.f32 0.0, %v4286
  %v4288 = vpop.f32.mrb[0].mxu0
  %4289 = vmatprep.mubr.f32.mxu0 0.0
  %4290 = vmatmul.mubr.f32.gmra.mrb[0].mxu0 %v3909
  %v4291 = vpop.f32.mrb[0].mxu0
  %v4292 = vadd.f32 0.0, %v4291
  %v4293 = vpop.f32.mrb[0].mxu0
  %4294 = vmatprep.mubr.f32.mxu0 0.0
  %4295 = vmatmul.mubr.f32.gmra.mrb[0].mxu0 %v3912
  %v4296 = vpop.f32.mrb[0].mxu0
  %v4297 = vadd.f32 0.0, %v4296
  %v4298 = vpop.f32.mrb[0].mxu0
  %4299 = vmatprep.mubr.f32.mxu0 0.0
  %4300 = vmatmul.mubr.f32.gmra.mrb[0].mxu0 %v3915
  %v4301 = vpop.f32.mrb[0].mxu0
  %v4302 = vadd.f32 0.0, %v4301
  %v4303 = vpop.f32.mrb[0].mxu0
  %4304 = vdwg.mxu0
  %v4305 = vadd.f32 %v3595, %v3987
  %v4306 = vadd.f32 %v3596, %v3992
  %v4307 = vadd.f32 %v3597, %v3997
  %v4308 = vadd.f32 %v3598, %v4002
  %v4309 = vadd.f32 %v3599, %v4007
  %v4310 = vadd.f32 %v3600, %v4012
  %v4311 = vadd.f32 %v3601, %v4017
  %v4312 = vadd.f32 %v3602, %v4022
  %v4313 = vadd.f32 %v3603, %v4027
  %v4314 = vadd.f32 %v3604, %v4032
  %v4315 = vadd.f32 %v3605, %v4037
  %v4316 = vadd.f32 %v3606, %v4042
  %v4317 = vadd.f32 %v3607, %v4047
  %v4318 = vadd.f32 %v3608, %v4052
  %v4319 = vadd.f32 %v3609, %v4057
  %v4320 = vadd.f32 %v3610, %v4062
  %v4321 = vadd.f32 %v3611, %v4067
  %v4322 = vadd.f32 %v3612, %v4072
  %v4323 = vadd.f32 %v3613, %v4077
  %v4324 = vadd.f32 %v3614, %v4082
  %v4325 = vadd.f32 %v3615, %v4087
  %v4326 = vadd.f32 %v3616, %v4092
  %v4327 = vadd.f32 %v3617, %v4097
  %v4328 = vadd.f32 %v3618, %v4102
  %v4329 = vadd.f32 %v3619, %v4107
  %v4330 = vadd.f32 %v3620, %v4112
  %v4331 = vadd.f32 %v3621, %v4117
  %v4332 = vadd.f32 %v3622, %v4122
  %v4333 = vadd.f32 %v3623, %v4127
  %v4334 = vadd.f32 %v3624, %v4132
  %v4335 = vadd.f32 %v3625, %v4137
  %v4336 = vadd.f32 %v3626, %v4142
  %v4337 = vadd.f32 %v3627, %v4147
  %v4338 = vadd.f32 %v3628, %v4152
  %v4339 = vadd.f32 %v3629, %v4157
  %v4340 = vadd.f32 %v3630, %v4162
  %v4341 = vadd.f32 %v3631, %v4167
  %v4342 = vadd.f32 %v3632, %v4172
  %v4343 = vadd.f32 %v3633, %v4177
  %v4344 = vadd.f32 %v3634, %v4182
  %v4345 = vadd.f32 %v3635, %v4187
  %v4346 = vadd.f32 %v3636, %v4192
  %v4347 = vadd.f32 %v3637, %v4197
  %v4348 = vadd.f32 %v3638, %v4202
  %v4349 = vadd.f32 %v3639, %v4207
  %v4350 = vadd.f32 %v3640, %v4212
  %v4351 = vadd.f32 %v3641, %v4217
  %v4352 = vadd.f32 %v3642, %v4222
  %v4353 = vadd.f32 %v3643, %v4227
  %v4354 = vadd.f32 %v3644, %v4232
  %v4355 = vadd.f32 %v3645, %v4237
  %v4356 = vadd.f32 %v3646, %v4242
  %v4357 = vadd.f32 %v3647, %v4247
  %v4358 = vadd.f32 %v3648, %v4252
  %v4359 = vadd.f32 %v3649, %v4257
  %v4360 = vadd.f32 %v3650, %v4262
  %v4361 = vadd.f32 %v3651, %v4267
  %v4362 = vadd.f32 %v3652, %v4272
  %v4363 = vadd.f32 %v3653, %v4277
  %v4364 = vadd.f32 %v3654, %v4282
  %v4365 = vadd.f32 %v3655, %v4287
  %v4366 = vadd.f32 %v3656, %v4292
  %v4367 = vadd.f32 %v3657, %v4297
  %v4368 = vadd.f32 %v3658, %v4302
  %s4369 = scalar_lea.vmem [#allocation2], 48
  %v4370 = vld [vmem:[%s4369] sm:$0xff]
  %v4371 = vld [vmem:[%s4369 + $0x8] sm:$0xff]
  %v4372 = vld [vmem:[%s4369 + $0x18] sm:$0xff]
  %v4373 = vld [vmem:[%s4369 + $0x20] sm:$0xff]
  %v4374 = vld [vmem:[%s4369 + $0x30] sm:$0xff]
  %v4375 = vld [vmem:[%s4369 + $0x38] sm:$0xff]
  %v4376 = vld [vmem:[%s4369 + $0x48] sm:$0xff]
  %v4377 = vld [vmem:[%s4369 + $0x50] sm:$0xff]
  %v4378 = vld [vmem:[%s4369 + $0x60] sm:$0xff]
  %v4379 = vld [vmem:[%s4369 + $0x68] sm:$0xff]
  %v4380 = vld [vmem:[%s4369 + $0x78] sm:$0xff]
  %v4381 = vld [vmem:[%s4369 + $0x80] sm:$0xff]
  %v4382 = vld [vmem:[%s4369 + $0x90] sm:$0xff]
  %v4383 = vld [vmem:[%s4369 + $0x98] sm:$0xff]
  %v4384 = vld [vmem:[%s4369 + $0xa8] sm:$0xff]
  %v4385 = vld [vmem:[%s4369 + $0xb0] sm:$0xff]
  %v4386 = vld [vmem:[%s4369 + $0xc0] sm:$0xff]
  %v4387 = vld [vmem:[%s4369 + $0xc8] sm:$0xff]
  %v4388 = vld [vmem:[%s4369 + $0xd8] sm:$0xff]
  %v4389 = vld [vmem:[%s4369 + $0xe0] sm:$0xff]
  %v4390 = vld [vmem:[%s4369 + $0xf0] sm:$0xff]
  %v4391 = vld [vmem:[%s4369 + $0xf8] sm:$0xff]
  %v4392 = vld [vmem:[%s4369 + $0x108] sm:$0xff]
  %v4393 = vld [vmem:[%s4369 + $0x110] sm:$0xff]
  %v4394 = vld [vmem:[%s4369 + $0x120] sm:$0xff]
  %v4395 = vld [vmem:[%s4369 + $0x128] sm:$0xff]
  %v4396 = vld [vmem:[%s4369 + $0x138] sm:$0xff]
  %v4397 = vld [vmem:[%s4369 + $0x140] sm:$0xff]
  %v4398 = vld [vmem:[%s4369 + $0x150] sm:$0xff]
  %v4399 = vld [vmem:[%s4369 + $0x158] sm:$0xff]
  %v4400 = vld [vmem:[%s4369 + $0x168] sm:$0xff]
  %v4401 = vld [vmem:[%s4369 + $0x170] sm:$0xff]
  %v4402 = vld [vmem:[%s4369 + $0x1b0] sm:$0xff]
  %v4403 = vld [vmem:[%s4369 + $0x1b8] sm:$0xff]
  %v4404 = vld [vmem:[%s4369 + $0x1c8] sm:$0xff]
  %v4405 = vld [vmem:[%s4369 + $0x1d0] sm:$0xff]
  %v4406 = vld [vmem:[%s4369 + $0x1e0] sm:$0xff]
  %v4407 = vld [vmem:[%s4369 + $0x1e8] sm:$0xff]
  %v4408 = vld [vmem:[%s4369 + $0x1f8] sm:$0xff]
  %v4409 = vld [vmem:[%s4369 + $0x200] sm:$0xff]
  %v4410 = vld [vmem:[%s4369 + $0x210] sm:$0xff]
  %v4411 = vld [vmem:[%s4369 + $0x218] sm:$0xff]
  %v4412 = vld [vmem:[%s4369 + $0x228] sm:$0xff]
  %v4413 = vld [vmem:[%s4369 + $0x230] sm:$0xff]
  %v4414 = vld [vmem:[%s4369 + $0x240] sm:$0xff]
  %v4415 = vld [vmem:[%s4369 + $0x248] sm:$0xff]
  %v4416 = vld [vmem:[%s4369 + $0x258] sm:$0xff]
  %v4417 = vld [vmem:[%s4369 + $0x260] sm:$0xff]
  %v4418 = vld [vmem:[%s4369 + $0x270] sm:$0xff]
  %v4419 = vld [vmem:[%s4369 + $0x278] sm:$0xff]
  %v4420 = vld [vmem:[%s4369 + $0x288] sm:$0xff]
  %v4421 = vld [vmem:[%s4369 + $0x290] sm:$0xff]
  %v4422 = vld [vmem:[%s4369 + $0x2a0] sm:$0xff]
  %v4423 = vld [vmem:[%s4369 + $0x2a8] sm:$0xff]
  %v4424 = vld [vmem:[%s4369 + $0x2b8] sm:$0xff]
  %v4425 = vld [vmem:[%s4369 + $0x2c0] sm:$0xff]
  %v4426 = vld [vmem:[%s4369 + $0x2d0] sm:$0xff]
  %v4427 = vld [vmem:[%s4369 + $0x2d8] sm:$0xff]
  %v4428 = vld [vmem:[%s4369 + $0x2e8] sm:$0xff]
  %v4429 = vld [vmem:[%s4369 + $0x2f0] sm:$0xff]
  %v4430 = vld [vmem:[%s4369 + $0x300] sm:$0xff]
  %v4431 = vld [vmem:[%s4369 + $0x308] sm:$0xff]
  %v4432 = vld [vmem:[%s4369 + $0x318] sm:$0xff]
  %v4433 = vld [vmem:[%s4369 + $0x320] sm:$0xff]
  %s4434 = scalar_lea.vmem %s1, 24
  %v4435 = vld [vmem:[%s4434] sm:$0xf]
  %v4437 = vsel %vm90, %v4370, 0
  %v4440 = vsel %vm90, %v4371, 0
  %v4443 = vsel %vm90, %v4372, 0
  %v4446 = vsel %vm90, %v4373, 0
  %v4449 = vsel %vm90, %v4374, 0
  %v4452 = vsel %vm90, %v4375, 0
  %v4455 = vsel %vm90, %v4376, 0
  %v4458 = vsel %vm90, %v4377, 0
  %v4461 = vsel %vm90, %v4378, 0
  %v4464 = vsel %vm90, %v4379, 0
  %v4467 = vsel %vm90, %v4380, 0
  %v4470 = vsel %vm90, %v4381, 0
  %v4473 = vsel %vm90, %v4382, 0
  %v4476 = vsel %vm90, %v4383, 0
  %v4479 = vsel %vm90, %v4384, 0
  %v4482 = vsel %vm90, %v4385, 0
  %v4485 = vsel %vm90, %v4386, 0
  %v4488 = vsel %vm90, %v4387, 0
  %v4491 = vsel %vm90, %v4388, 0
  %v4494 = vsel %vm90, %v4389, 0
  %v4497 = vsel %vm90, %v4390, 0
  %v4500 = vsel %vm90, %v4391, 0
  %v4503 = vsel %vm90, %v4392, 0
  %v4506 = vsel %vm90, %v4393, 0
  %v4509 = vsel %vm90, %v4394, 0
  %v4512 = vsel %vm90, %v4395, 0
  %v4515 = vsel %vm90, %v4396, 0
  %v4518 = vsel %vm90, %v4397, 0
  %v4521 = vsel %vm90, %v4398, 0
  %v4524 = vsel %vm90, %v4399, 0
  %v4527 = vsel %vm90, %v4400, 0
  %v4530 = vsel %vm90, %v4401, 0
  %v4533 = vsel %vm90, %v4402, 0
  %v4536 = vsel %vm90, %v4403, 0
  %v4539 = vsel %vm90, %v4404, 0
  %v4542 = vsel %vm90, %v4405, 0
  %v4545 = vsel %vm90, %v4406, 0
  %v4548 = vsel %vm90, %v4407, 0
  %v4551 = vsel %vm90, %v4408, 0
  %v4554 = vsel %vm90, %v4409, 0
  %v4557 = vsel %vm90, %v4410, 0
  %v4560 = vsel %vm90, %v4411, 0
  %v4563 = vsel %vm90, %v4412, 0
  %v4566 = vsel %vm90, %v4413, 0
  %v4569 = vsel %vm90, %v4414, 0
  %v4572 = vsel %vm90, %v4415, 0
  %v4575 = vsel %vm90, %v4416, 0
  %v4578 = vsel %vm90, %v4417, 0
  %v4581 = vsel %vm90, %v4418, 0
  %v4584 = vsel %vm90, %v4419, 0
  %v4587 = vsel %vm90, %v4420, 0
  %v4590 = vsel %vm90, %v4421, 0
  %v4593 = vsel %vm90, %v4422, 0
  %v4596 = vsel %vm90, %v4423, 0
  %v4599 = vsel %vm90, %v4424, 0
  %v4602 = vsel %vm90, %v4425, 0
  %v4605 = vsel %vm90, %v4426, 0
  %v4608 = vsel %vm90, %v4427, 0
  %v4611 = vsel %vm90, %v4428, 0
  %v4614 = vsel %vm90, %v4429, 0
  %v4617 = vsel %vm90, %v4430, 0
  %v4620 = vsel %vm90, %v4431, 0
  %v4623 = vsel %vm90, %v4432, 0
  %v4626 = vsel %vm90, %v4433, 0
  %v4629 = vsel %vm560, %v4435, 0
  %4631 = vmatprep.subr.mxu0 0.0
  %4632 = vmatpush1.msra.mxu0 %v4629
  %4633 = vmatprep.subr.mxu0 0.0
  %4634 = vmatpush1.msra.mxu0 0.0
  %4635 = vmatprep.subr.mxu0 0.0
  %4636 = vmatpush1.msra.mxu0 0.0
  %4637 = vmatprep.subr.mxu0 0.0
  %4638 = vmatpush1.msra.mxu0 0.0
  %4639 = vmatprep.subr.mxu0 0.0
  %4640 = vmatpush1.msra.mxu0 0.0
  %4641 = vmatprep.subr.mxu0 0.0
  %4642 = vmatpush1.msra.mxu0 0.0
  %4643 = vmatprep.subr.mxu0 0.0
  %4644 = vmatpush1.msra.mxu0 0.0
  %4645 = vmatprep.subr.mxu0 0.0
  %4646 = vmatpush1.msra.mxu0 0.0
  %4647 = vmatprep.subr.mxu0 0.0
  %4648 = vmatpush1.msra.mxu0 0.0
  %4649 = vmatprep.subr.mxu0 0.0
  %4650 = vmatpush1.msra.mxu0 0.0
  %4651 = vmatprep.subr.mxu0 0.0
  %4652 = vmatpush1.msra.mxu0 0.0
  %4653 = vmatprep.subr.mxu0 0.0
  %4654 = vmatpush1.msra.mxu0 0.0
  %4655 = vmatprep.subr.mxu0 0.0
  %4656 = vmatpush1.msra.mxu0 0.0
  %4657 = vmatprep.subr.mxu0 0.0
  %4658 = vmatpush1.msra.mxu0 0.0
  %4659 = vmatprep.subr.mxu0 0.0
  %4660 = vmatpush1.msra.mxu0 0.0
  %4661 = vmatprep.subr.mxu0 0.0
  %4662 = vmatpush1.msra.mxu0 0.0
  %4663 = vmatprep.subr.mxu0 0.0
  %4664 = vmatpush1.msra.mxu0 0.0
  %4665 = vmatprep.subr.mxu0 0.0
  %4666 = vmatpush1.msra.mxu0 0.0
  %4667 = vmatprep.subr.mxu0 0.0
  %4668 = vmatpush1.msra.mxu0 0.0
  %4669 = vmatprep.subr.mxu0 0.0
  %4670 = vmatpush1.msra.mxu0 0.0
  %4671 = vmatprep.subr.mxu0 0.0
  %4672 = vmatpush1.msra.mxu0 0.0
  %4673 = vmatprep.subr.mxu0 0.0
  %4674 = vmatpush1.msra.mxu0 0.0
  %4675 = vmatprep.subr.mxu0 0.0
  %4676 = vmatpush1.msra.mxu0 0.0
  %4677 = vmatprep.subr.mxu0 0.0
  %4678 = vmatpush1.msra.mxu0 0.0
  %4679 = vmatprep.subr.mxu0 0.0
  %4680 = vmatpush1.msra.mxu0 0.0
  %4681 = vmatprep.subr.mxu0 0.0
  %4682 = vmatpush1.msra.mxu0 0.0
  %4683 = vmatprep.subr.mxu0 0.0
  %4684 = vmatpush1.msra.mxu0 0.0
  %4685 = vmatprep.subr.mxu0 0.0
  %4686 = vmatpush1.msra.mxu0 0.0
  %4687 = vmatprep.subr.mxu0 0.0
  %4688 = vmatpush1.msra.mxu0 0.0
  %4689 = vmatprep.subr.mxu0 0.0
  %4690 = vmatpush1.msra.mxu0 0.0
  %4691 = vmatprep.subr.mxu0 0.0
  %4692 = vmatpush1.msra.mxu0 0.0
  %4693 = vmatprep.subr.mxu0 0.0
  %4694 = vmatpush1.msra.mxu0 0.0
  %4695 = vmatprep.mubr.f32.mxu0 0.0
  %4696 = vmatmul.mubr.f32.gmra.mrb[0].mxu0 %v4437
  %v4697 = vpop.f32.mrb[0].mxu0
  %v4698 = vadd.f32 0.0, %v4697
  %v4699 = vpop.f32.mrb[0].mxu0
  %4700 = vmatprep.mubr.f32.mxu0 0.0
  %4701 = vmatmul.mubr.f32.gmra.mrb[0].mxu0 %v4440
  %v4702 = vpop.f32.mrb[0].mxu0
  %v4703 = vadd.f32 0.0, %v4702
  %v4704 = vpop.f32.mrb[0].mxu0
  %4705 = vmatprep.mubr.f32.mxu0 0.0
  %4706 = vmatmul.mubr.f32.gmra.mrb[0].mxu0 %v4443
  %v4707 = vpop.f32.mrb[0].mxu0
  %v4708 = vadd.f32 0.0, %v4707
  %v4709 = vpop.f32.mrb[0].mxu0
  %4710 = vmatprep.mubr.f32.mxu0 0.0
  %4711 = vmatmul.mubr.f32.gmra.mrb[0].mxu0 %v4446
  %v4712 = vpop.f32.mrb[0].mxu0
  %v4713 = vadd.f32 0.0, %v4712
  %v4714 = vpop.f32.mrb[0].mxu0
  %4715 = vmatprep.mubr.f32.mxu0 0.0
  %4716 = vmatmul.mubr.f32.gmra.mrb[0].mxu0 %v4449
  %v4717 = vpop.f32.mrb[0].mxu0
  %v4718 = vadd.f32 0.0, %v4717
  %v4719 = vpop.f32.mrb[0].mxu0
  %4720 = vmatprep.mubr.f32.mxu0 0.0
  %4721 = vmatmul.mubr.f32.gmra.mrb[0].mxu0 %v4452
  %v4722 = vpop.f32.mrb[0].mxu0
  %v4723 = vadd.f32 0.0, %v4722
  %v4724 = vpop.f32.mrb[0].mxu0
  %4725 = vmatprep.mubr.f32.mxu0 0.0
  %4726 = vmatmul.mubr.f32.gmra.mrb[0].mxu0 %v4455
  %v4727 = vpop.f32.mrb[0].mxu0
  %v4728 = vadd.f32 0.0, %v4727
  %v4729 = vpop.f32.mrb[0].mxu0
  %4730 = vmatprep.mubr.f32.mxu0 0.0
  %4731 = vmatmul.mubr.f32.gmra.mrb[0].mxu0 %v4458
  %v4732 = vpop.f32.mrb[0].mxu0
  %v4733 = vadd.f32 0.0, %v4732
  %v4734 = vpop.f32.mrb[0].mxu0
  %4735 = vmatprep.mubr.f32.mxu0 0.0
  %4736 = vmatmul.mubr.f32.gmra.mrb[0].mxu0 %v4461
  %v4737 = vpop.f32.mrb[0].mxu0
  %v4738 = vadd.f32 0.0, %v4737
  %v4739 = vpop.f32.mrb[0].mxu0
  %4740 = vmatprep.mubr.f32.mxu0 0.0
  %4741 = vmatmul.mubr.f32.gmra.mrb[0].mxu0 %v4464
  %v4742 = vpop.f32.mrb[0].mxu0
  %v4743 = vadd.f32 0.0, %v4742
  %v4744 = vpop.f32.mrb[0].mxu0
  %4745 = vmatprep.mubr.f32.mxu0 0.0
  %4746 = vmatmul.mubr.f32.gmra.mrb[0].mxu0 %v4467
  %v4747 = vpop.f32.mrb[0].mxu0
  %v4748 = vadd.f32 0.0, %v4747
  %v4749 = vpop.f32.mrb[0].mxu0
  %4750 = vmatprep.mubr.f32.mxu0 0.0
  %4751 = vmatmul.mubr.f32.gmra.mrb[0].mxu0 %v4470
  %v4752 = vpop.f32.mrb[0].mxu0
  %v4753 = vadd.f32 0.0, %v4752
  %v4754 = vpop.f32.mrb[0].mxu0
  %4755 = vmatprep.mubr.f32.mxu0 0.0
  %4756 = vmatmul.mubr.f32.gmra.mrb[0].mxu0 %v4473
  %v4757 = vpop.f32.mrb[0].mxu0
  %v4758 = vadd.f32 0.0, %v4757
  %v4759 = vpop.f32.mrb[0].mxu0
  %4760 = vmatprep.mubr.f32.mxu0 0.0
  %4761 = vmatmul.mubr.f32.gmra.mrb[0].mxu0 %v4476
  %v4762 = vpop.f32.mrb[0].mxu0
  %v4763 = vadd.f32 0.0, %v4762
  %v4764 = vpop.f32.mrb[0].mxu0
  %4765 = vmatprep.mubr.f32.mxu0 0.0
  %4766 = vmatmul.mubr.f32.gmra.mrb[0].mxu0 %v4479
  %v4767 = vpop.f32.mrb[0].mxu0
  %v4768 = vadd.f32 0.0, %v4767
  %v4769 = vpop.f32.mrb[0].mxu0
  %4770 = vmatprep.mubr.f32.mxu0 0.0
  %4771 = vmatmul.mubr.f32.gmra.mrb[0].mxu0 %v4482
  %v4772 = vpop.f32.mrb[0].mxu0
  %v4773 = vadd.f32 0.0, %v4772
  %v4774 = vpop.f32.mrb[0].mxu0
  %4775 = vmatprep.mubr.f32.mxu0 0.0
  %4776 = vmatmul.mubr.f32.gmra.mrb[0].mxu0 %v4485
  %v4777 = vpop.f32.mrb[0].mxu0
  %v4778 = vadd.f32 0.0, %v4777
  %v4779 = vpop.f32.mrb[0].mxu0
  %4780 = vmatprep.mubr.f32.mxu0 0.0
  %4781 = vmatmul.mubr.f32.gmra.mrb[0].mxu0 %v4488
  %v4782 = vpop.f32.mrb[0].mxu0
  %v4783 = vadd.f32 0.0, %v4782
  %v4784 = vpop.f32.mrb[0].mxu0
  %4785 = vmatprep.mubr.f32.mxu0 0.0
  %4786 = vmatmul.mubr.f32.gmra.mrb[0].mxu0 %v4491
  %v4787 = vpop.f32.mrb[0].mxu0
  %v4788 = vadd.f32 0.0, %v4787
  %v4789 = vpop.f32.mrb[0].mxu0
  %4790 = vmatprep.mubr.f32.mxu0 0.0
  %4791 = vmatmul.mubr.f32.gmra.mrb[0].mxu0 %v4494
  %v4792 = vpop.f32.mrb[0].mxu0
  %v4793 = vadd.f32 0.0, %v4792
  %v4794 = vpop.f32.mrb[0].mxu0
  %4795 = vmatprep.mubr.f32.mxu0 0.0
  %4796 = vmatmul.mubr.f32.gmra.mrb[0].mxu0 %v4497
  %v4797 = vpop.f32.mrb[0].mxu0
  %v4798 = vadd.f32 0.0, %v4797
  %v4799 = vpop.f32.mrb[0].mxu0
  %4800 = vmatprep.mubr.f32.mxu0 0.0
  %4801 = vmatmul.mubr.f32.gmra.mrb[0].mxu0 %v4500
  %v4802 = vpop.f32.mrb[0].mxu0
  %v4803 = vadd.f32 0.0, %v4802
  %v4804 = vpop.f32.mrb[0].mxu0
  %4805 = vmatprep.mubr.f32.mxu0 0.0
  %4806 = vmatmul.mubr.f32.gmra.mrb[0].mxu0 %v4503
  %v4807 = vpop.f32.mrb[0].mxu0
  %v4808 = vadd.f32 0.0, %v4807
  %v4809 = vpop.f32.mrb[0].mxu0
  %4810 = vmatprep.mubr.f32.mxu0 0.0
  %4811 = vmatmul.mubr.f32.gmra.mrb[0].mxu0 %v4506
  %v4812 = vpop.f32.mrb[0].mxu0
  %v4813 = vadd.f32 0.0, %v4812
  %v4814 = vpop.f32.mrb[0].mxu0
  %4815 = vmatprep.mubr.f32.mxu0 0.0
  %4816 = vmatmul.mubr.f32.gmra.mrb[0].mxu0 %v4509
  %v4817 = vpop.f32.mrb[0].mxu0
  %v4818 = vadd.f32 0.0, %v4817
  %v4819 = vpop.f32.mrb[0].mxu0
  %4820 = vmatprep.mubr.f32.mxu0 0.0
  %4821 = vmatmul.mubr.f32.gmra.mrb[0].mxu0 %v4512
  %v4822 = vpop.f32.mrb[0].mxu0
  %v4823 = vadd.f32 0.0, %v4822
  %v4824 = vpop.f32.mrb[0].mxu0
  %4825 = vmatprep.mubr.f32.mxu0 0.0
  %4826 = vmatmul.mubr.f32.gmra.mrb[0].mxu0 %v4515
  %v4827 = vpop.f32.mrb[0].mxu0
  %v4828 = vadd.f32 0.0, %v4827
  %v4829 = vpop.f32.mrb[0].mxu0
  %4830 = vmatprep.mubr.f32.mxu0 0.0
  %4831 = vmatmul.mubr.f32.gmra.mrb[0].mxu0 %v4518
  %v4832 = vpop.f32.mrb[0].mxu0
  %v4833 = vadd.f32 0.0, %v4832
  %v4834 = vpop.f32.mrb[0].mxu0
  %4835 = vmatprep.mubr.f32.mxu0 0.0
  %4836 = vmatmul.mubr.f32.gmra.mrb[0].mxu0 %v4521
  %v4837 = vpop.f32.mrb[0].mxu0
  %v4838 = vadd.f32 0.0, %v4837
  %v4839 = vpop.f32.mrb[0].mxu0
  %4840 = vmatprep.mubr.f32.mxu0 0.0
  %4841 = vmatmul.mubr.f32.gmra.mrb[0].mxu0 %v4524
  %v4842 = vpop.f32.mrb[0].mxu0
  %v4843 = vadd.f32 0.0, %v4842
  %v4844 = vpop.f32.mrb[0].mxu0
  %4845 = vmatprep.mubr.f32.mxu0 0.0
  %4846 = vmatmul.mubr.f32.gmra.mrb[0].mxu0 %v4527
  %v4847 = vpop.f32.mrb[0].mxu0
  %v4848 = vadd.f32 0.0, %v4847
  %v4849 = vpop.f32.mrb[0].mxu0
  %4850 = vmatprep.mubr.f32.mxu0 0.0
  %4851 = vmatmul.mubr.f32.gmra.mrb[0].mxu0 %v4530
  %v4852 = vpop.f32.mrb[0].mxu0
  %v4853 = vadd.f32 0.0, %v4852
  %v4854 = vpop.f32.mrb[0].mxu0
  %4855 = vmatprep.mubr.f32.mxu0 0.0
  %4856 = vmatmul.mubr.f32.gmra.mrb[0].mxu0 %v4533
  %v4857 = vpop.f32.mrb[0].mxu0
  %v4858 = vadd.f32 0.0, %v4857
  %v4859 = vpop.f32.mrb[0].mxu0
  %4860 = vmatprep.mubr.f32.mxu0 0.0
  %4861 = vmatmul.mubr.f32.gmra.mrb[0].mxu0 %v4536
  %v4862 = vpop.f32.mrb[0].mxu0
  %v4863 = vadd.f32 0.0, %v4862
  %v4864 = vpop.f32.mrb[0].mxu0
  %4865 = vmatprep.mubr.f32.mxu0 0.0
  %4866 = vmatmul.mubr.f32.gmra.mrb[0].mxu0 %v4539
  %v4867 = vpop.f32.mrb[0].mxu0
  %v4868 = vadd.f32 0.0, %v4867
  %v4869 = vpop.f32.mrb[0].mxu0
  %4870 = vmatprep.mubr.f32.mxu0 0.0
  %4871 = vmatmul.mubr.f32.gmra.mrb[0].mxu0 %v4542
  %v4872 = vpop.f32.mrb[0].mxu0
  %v4873 = vadd.f32 0.0, %v4872
  %v4874 = vpop.f32.mrb[0].mxu0
  %4875 = vmatprep.mubr.f32.mxu0 0.0
  %4876 = vmatmul.mubr.f32.gmra.mrb[0].mxu0 %v4545
  %v4877 = vpop.f32.mrb[0].mxu0
  %v4878 = vadd.f32 0.0, %v4877
  %v4879 = vpop.f32.mrb[0].mxu0
  %4880 = vmatprep.mubr.f32.mxu0 0.0
  %4881 = vmatmul.mubr.f32.gmra.mrb[0].mxu0 %v4548
  %v4882 = vpop.f32.mrb[0].mxu0
  %v4883 = vadd.f32 0.0, %v4882
  %v4884 = vpop.f32.mrb[0].mxu0
  %4885 = vmatprep.mubr.f32.mxu0 0.0
  %4886 = vmatmul.mubr.f32.gmra.mrb[0].mxu0 %v4551
  %v4887 = vpop.f32.mrb[0].mxu0
  %v4888 = vadd.f32 0.0, %v4887
  %v4889 = vpop.f32.mrb[0].mxu0
  %4890 = vmatprep.mubr.f32.mxu0 0.0
  %4891 = vmatmul.mubr.f32.gmra.mrb[0].mxu0 %v4554
  %v4892 = vpop.f32.mrb[0].mxu0
  %v4893 = vadd.f32 0.0, %v4892
  %v4894 = vpop.f32.mrb[0].mxu0
  %4895 = vmatprep.mubr.f32.mxu0 0.0
  %4896 = vmatmul.mubr.f32.gmra.mrb[0].mxu0 %v4557
  %v4897 = vpop.f32.mrb[0].mxu0
  %v4898 = vadd.f32 0.0, %v4897
  %v4899 = vpop.f32.mrb[0].mxu0
  %4900 = vmatprep.mubr.f32.mxu0 0.0
  %4901 = vmatmul.mubr.f32.gmra.mrb[0].mxu0 %v4560
  %v4902 = vpop.f32.mrb[0].mxu0
  %v4903 = vadd.f32 0.0, %v4902
  %v4904 = vpop.f32.mrb[0].mxu0
  %4905 = vmatprep.mubr.f32.mxu0 0.0
  %4906 = vmatmul.mubr.f32.gmra.mrb[0].mxu0 %v4563
  %v4907 = vpop.f32.mrb[0].mxu0
  %v4908 = vadd.f32 0.0, %v4907
  %v4909 = vpop.f32.mrb[0].mxu0
  %4910 = vmatprep.mubr.f32.mxu0 0.0
  %4911 = vmatmul.mubr.f32.gmra.mrb[0].mxu0 %v4566
  %v4912 = vpop.f32.mrb[0].mxu0
  %v4913 = vadd.f32 0.0, %v4912
  %v4914 = vpop.f32.mrb[0].mxu0
  %4915 = vmatprep.mubr.f32.mxu0 0.0
  %4916 = vmatmul.mubr.f32.gmra.mrb[0].mxu0 %v4569
  %v4917 = vpop.f32.mrb[0].mxu0
  %v4918 = vadd.f32 0.0, %v4917
  %v4919 = vpop.f32.mrb[0].mxu0
  %4920 = vmatprep.mubr.f32.mxu0 0.0
  %4921 = vmatmul.mubr.f32.gmra.mrb[0].mxu0 %v4572
  %v4922 = vpop.f32.mrb[0].mxu0
  %v4923 = vadd.f32 0.0, %v4922
  %v4924 = vpop.f32.mrb[0].mxu0
  %4925 = vmatprep.mubr.f32.mxu0 0.0
  %4926 = vmatmul.mubr.f32.gmra.mrb[0].mxu0 %v4575
  %v4927 = vpop.f32.mrb[0].mxu0
  %v4928 = vadd.f32 0.0, %v4927
  %v4929 = vpop.f32.mrb[0].mxu0
  %4930 = vmatprep.mubr.f32.mxu0 0.0
  %4931 = vmatmul.mubr.f32.gmra.mrb[0].mxu0 %v4578
  %v4932 = vpop.f32.mrb[0].mxu0
  %v4933 = vadd.f32 0.0, %v4932
  %v4934 = vpop.f32.mrb[0].mxu0
  %4935 = vmatprep.mubr.f32.mxu0 0.0
  %4936 = vmatmul.mubr.f32.gmra.mrb[0].mxu0 %v4581
  %v4937 = vpop.f32.mrb[0].mxu0
  %v4938 = vadd.f32 0.0, %v4937
  %v4939 = vpop.f32.mrb[0].mxu0
  %4940 = vmatprep.mubr.f32.mxu0 0.0
  %4941 = vmatmul.mubr.f32.gmra.mrb[0].mxu0 %v4584
  %v4942 = vpop.f32.mrb[0].mxu0
  %v4943 = vadd.f32 0.0, %v4942
  %v4944 = vpop.f32.mrb[0].mxu0
  %4945 = vmatprep.mubr.f32.mxu0 0.0
  %4946 = vmatmul.mubr.f32.gmra.mrb[0].mxu0 %v4587
  %v4947 = vpop.f32.mrb[0].mxu0
  %v4948 = vadd.f32 0.0, %v4947
  %v4949 = vpop.f32.mrb[0].mxu0
  %4950 = vmatprep.mubr.f32.mxu0 0.0
  %4951 = vmatmul.mubr.f32.gmra.mrb[0].mxu0 %v4590
  %v4952 = vpop.f32.mrb[0].mxu0
  %v4953 = vadd.f32 0.0, %v4952
  %v4954 = vpop.f32.mrb[0].mxu0
  %4955 = vmatprep.mubr.f32.mxu0 0.0
  %4956 = vmatmul.mubr.f32.gmra.mrb[0].mxu0 %v4593
  %v4957 = vpop.f32.mrb[0].mxu0
  %v4958 = vadd.f32 0.0, %v4957
  %v4959 = vpop.f32.mrb[0].mxu0
  %4960 = vmatprep.mubr.f32.mxu0 0.0
  %4961 = vmatmul.mubr.f32.gmra.mrb[0].mxu0 %v4596
  %v4962 = vpop.f32.mrb[0].mxu0
  %v4963 = vadd.f32 0.0, %v4962
  %v4964 = vpop.f32.mrb[0].mxu0
  %4965 = vmatprep.mubr.f32.mxu0 0.0
  %4966 = vmatmul.mubr.f32.gmra.mrb[0].mxu0 %v4599
  %v4967 = vpop.f32.mrb[0].mxu0
  %v4968 = vadd.f32 0.0, %v4967
  %v4969 = vpop.f32.mrb[0].mxu0
  %4970 = vmatprep.mubr.f32.mxu0 0.0
  %4971 = vmatmul.mubr.f32.gmra.mrb[0].mxu0 %v4602
  %v4972 = vpop.f32.mrb[0].mxu0
  %v4973 = vadd.f32 0.0, %v4972
  %v4974 = vpop.f32.mrb[0].mxu0
  %4975 = vmatprep.mubr.f32.mxu0 0.0
  %4976 = vmatmul.mubr.f32.gmra.mrb[0].mxu0 %v4605
  %v4977 = vpop.f32.mrb[0].mxu0
  %v4978 = vadd.f32 0.0, %v4977
  %v4979 = vpop.f32.mrb[0].mxu0
  %4980 = vmatprep.mubr.f32.mxu0 0.0
  %4981 = vmatmul.mubr.f32.gmra.mrb[0].mxu0 %v4608
  %v4982 = vpop.f32.mrb[0].mxu0
  %v4983 = vadd.f32 0.0, %v4982
  %v4984 = vpop.f32.mrb[0].mxu0
  %4985 = vmatprep.mubr.f32.mxu0 0.0
  %4986 = vmatmul.mubr.f32.gmra.mrb[0].mxu0 %v4611
  %v4987 = vpop.f32.mrb[0].mxu0
  %v4988 = vadd.f32 0.0, %v4987
  %v4989 = vpop.f32.mrb[0].mxu0
  %4990 = vmatprep.mubr.f32.mxu0 0.0
  %4991 = vmatmul.mubr.f32.gmra.mrb[0].mxu0 %v4614
  %v4992 = vpop.f32.mrb[0].mxu0
  %v4993 = vadd.f32 0.0, %v4992
  %v4994 = vpop.f32.mrb[0].mxu0
  %4995 = vmatprep.mubr.f32.mxu0 0.0
  %4996 = vmatmul.mubr.f32.gmra.mrb[0].mxu0 %v4617
  %v4997 = vpop.f32.mrb[0].mxu0
  %v4998 = vadd.f32 0.0, %v4997
  %v4999 = vpop.f32.mrb[0].mxu0
  %5000 = vmatprep.mubr.f32.mxu0 0.0
  %5001 = vmatmul.mubr.f32.gmra.mrb[0].mxu0 %v4620
  %v5002 = vpop.f32.mrb[0].mxu0
  %v5003 = vadd.f32 0.0, %v5002
  %v5004 = vpop.f32.mrb[0].mxu0
  %5005 = vmatprep.mubr.f32.mxu0 0.0
  %5006 = vmatmul.mubr.f32.gmra.mrb[0].mxu0 %v4623
  %v5007 = vpop.f32.mrb[0].mxu0
  %v5008 = vadd.f32 0.0, %v5007
  %v5009 = vpop.f32.mrb[0].mxu0
  %5010 = vmatprep.mubr.f32.mxu0 0.0
  %5011 = vmatmul.mubr.f32.gmra.mrb[0].mxu0 %v4626
  %v5012 = vpop.f32.mrb[0].mxu0
  %v5013 = vadd.f32 0.0, %v5012
  %v5014 = vpop.f32.mrb[0].mxu0
  %5015 = vdwg.mxu0
  %v5016 = vadd.f32 %v4305, %v4698
  %v5017 = vadd.f32 %v4306, %v4703
  %v5018 = vadd.f32 %v4307, %v4708
  %v5019 = vadd.f32 %v4308, %v4713
  %v5020 = vadd.f32 %v4309, %v4718
  %v5021 = vadd.f32 %v4310, %v4723
  %v5022 = vadd.f32 %v4311, %v4728
  %v5023 = vadd.f32 %v4312, %v4733
  %v5024 = vadd.f32 %v4313, %v4738
  %v5025 = vadd.f32 %v4314, %v4743
  %v5026 = vadd.f32 %v4315, %v4748
  %v5027 = vadd.f32 %v4316, %v4753
  %v5028 = vadd.f32 %v4317, %v4758
  %v5029 = vadd.f32 %v4318, %v4763
  %v5030 = vadd.f32 %v4319, %v4768
  %v5031 = vadd.f32 %v4320, %v4773
  %v5032 = vadd.f32 %v4321, %v4778
  %v5033 = vadd.f32 %v4322, %v4783
  %v5034 = vadd.f32 %v4323, %v4788
  %v5035 = vadd.f32 %v4324, %v4793
  %v5036 = vadd.f32 %v4325, %v4798
  %v5037 = vadd.f32 %v4326, %v4803
  %v5038 = vadd.f32 %v4327, %v4808
  %v5039 = vadd.f32 %v4328, %v4813
  %v5040 = vadd.f32 %v4329, %v4818
  %v5041 = vadd.f32 %v4330, %v4823
  %v5042 = vadd.f32 %v4331, %v4828
  %v5043 = vadd.f32 %v4332, %v4833
  %v5044 = vadd.f32 %v4333, %v4838
  %v5045 = vadd.f32 %v4334, %v4843
  %v5046 = vadd.f32 %v4335, %v4848
  %v5047 = vadd.f32 %v4336, %v4853
  %v5048 = vadd.f32 %v4337, %v4858
  %v5049 = vadd.f32 %v4338, %v4863
  %v5050 = vadd.f32 %v4339, %v4868
  %v5051 = vadd.f32 %v4340, %v4873
  %v5052 = vadd.f32 %v4341, %v4878
  %v5053 = vadd.f32 %v4342, %v4883
  %v5054 = vadd.f32 %v4343, %v4888
  %v5055 = vadd.f32 %v4344, %v4893
  %v5056 = vadd.f32 %v4345, %v4898
  %v5057 = vadd.f32 %v4346, %v4903
  %v5058 = vadd.f32 %v4347, %v4908
  %v5059 = vadd.f32 %v4348, %v4913
  %v5060 = vadd.f32 %v4349, %v4918
  %v5061 = vadd.f32 %v4350, %v4923
  %v5062 = vadd.f32 %v4351, %v4928
  %v5063 = vadd.f32 %v4352, %v4933
  %v5064 = vadd.f32 %v4353, %v4938
  %v5065 = vadd.f32 %v4354, %v4943
  %v5066 = vadd.f32 %v4355, %v4948
  %v5067 = vadd.f32 %v4356, %v4953
  %v5068 = vadd.f32 %v4357, %v4958
  %v5069 = vadd.f32 %v4358, %v4963
  %v5070 = vadd.f32 %v4359, %v4968
  %v5071 = vadd.f32 %v4360, %v4973
  %v5072 = vadd.f32 %v4361, %v4978
  %v5073 = vadd.f32 %v4362, %v4983
  %v5074 = vadd.f32 %v4363, %v4988
  %v5075 = vadd.f32 %v4364, %v4993
  %v5076 = vadd.f32 %v4365, %v4998
  %v5077 = vadd.f32 %v4366, %v5003
  %v5078 = vadd.f32 %v4367, %v5008
  %v5079 = vadd.f32 %v4368, %v5013
  %v5080 = vld [vmem:[%s4369 + $0x1] sm:$0xff]
  %v5081 = vld [vmem:[%s4369 + $0x9] sm:$0xff]
  %v5082 = vld [vmem:[%s4369 + $0x19] sm:$0xff]
  %v5083 = vld [vmem:[%s4369 + $0x21] sm:$0xff]
  %v5084 = vld [vmem:[%s4369 + $0x31] sm:$0xff]
  %v5085 = vld [vmem:[%s4369 + $0x39] sm:$0xff]
  %v5086 = vld [vmem:[%s4369 + $0x49] sm:$0xff]
  %v5087 = vld [vmem:[%s4369 + $0x51] sm:$0xff]
  %v5088 = vld [vmem:[%s4369 + $0x61] sm:$0xff]
  %v5089 = vld [vmem:[%s4369 + $0x69] sm:$0xff]
  %v5090 = vld [vmem:[%s4369 + $0x79] sm:$0xff]
  %v5091 = vld [vmem:[%s4369 + $0x81] sm:$0xff]
  %v5092 = vld [vmem:[%s4369 + $0x91] sm:$0xff]
  %v5093 = vld [vmem:[%s4369 + $0x99] sm:$0xff]
  %v5094 = vld [vmem:[%s4369 + $0xa9] sm:$0xff]
  %v5095 = vld [vmem:[%s4369 + $0xb1] sm:$0xff]
  %v5096 = vld [vmem:[%s4369 + $0xc1] sm:$0xff]
  %v5097 = vld [vmem:[%s4369 + $0xc9] sm:$0xff]
  %v5098 = vld [vmem:[%s4369 + $0xd9] sm:$0xff]
  %v5099 = vld [vmem:[%s4369 + $0xe1] sm:$0xff]
  %v5100 = vld [vmem:[%s4369 + $0xf1] sm:$0xff]
  %v5101 = vld [vmem:[%s4369 + $0xf9] sm:$0xff]
  %v5102 = vld [vmem:[%s4369 + $0x109] sm:$0xff]
  %v5103 = vld [vmem:[%s4369 + $0x111] sm:$0xff]
  %v5104 = vld [vmem:[%s4369 + $0x121] sm:$0xff]
  %v5105 = vld [vmem:[%s4369 + $0x129] sm:$0xff]
  %v5106 = vld [vmem:[%s4369 + $0x139] sm:$0xff]
  %v5107 = vld [vmem:[%s4369 + $0x141] sm:$0xff]
  %v5108 = vld [vmem:[%s4369 + $0x151] sm:$0xff]
  %v5109 = vld [vmem:[%s4369 + $0x159] sm:$0xff]
  %v5110 = vld [vmem:[%s4369 + $0x169] sm:$0xff]
  %v5111 = vld [vmem:[%s4369 + $0x171] sm:$0xff]
  %v5112 = vld [vmem:[%s4369 + $0x1b1] sm:$0xff]
  %v5113 = vld [vmem:[%s4369 + $0x1b9] sm:$0xff]
  %v5114 = vld [vmem:[%s4369 + $0x1c9] sm:$0xff]
  %v5115 = vld [vmem:[%s4369 + $0x1d1] sm:$0xff]
  %v5116 = vld [vmem:[%s4369 + $0x1e1] sm:$0xff]
  %v5117 = vld [vmem:[%s4369 + $0x1e9] sm:$0xff]
  %v5118 = vld [vmem:[%s4369 + $0x1f9] sm:$0xff]
  %v5119 = vld [vmem:[%s4369 + $0x201] sm:$0xff]
  %v5120 = vld [vmem:[%s4369 + $0x211] sm:$0xff]
  %v5121 = vld [vmem:[%s4369 + $0x219] sm:$0xff]
  %v5122 = vld [vmem:[%s4369 + $0x229] sm:$0xff]
  %v5123 = vld [vmem:[%s4369 + $0x231] sm:$0xff]
  %v5124 = vld [vmem:[%s4369 + $0x241] sm:$0xff]
  %v5125 = vld [vmem:[%s4369 + $0x249] sm:$0xff]
  %v5126 = vld [vmem:[%s4369 + $0x259] sm:$0xff]
  %v5127 = vld [vmem:[%s4369 + $0x261] sm:$0xff]
  %v5128 = vld [vmem:[%s4369 + $0x271] sm:$0xff]
  %v5129 = vld [vmem:[%s4369 + $0x279] sm:$0xff]
  %v5130 = vld [vmem:[%s4369 + $0x289] sm:$0xff]
  %v5131 = vld [vmem:[%s4369 + $0x291] sm:$0xff]
  %v5132 = vld [vmem:[%s4369 + $0x2a1] sm:$0xff]
  %v5133 = vld [vmem:[%s4369 + $0x2a9] sm:$0xff]
  %v5134 = vld [vmem:[%s4369 + $0x2b9] sm:$0xff]
  %v5135 = vld [vmem:[%s4369 + $0x2c1] sm:$0xff]
  %v5136 = vld [vmem:[%s4369 + $0x2d1] sm:$0xff]
  %v5137 = vld [vmem:[%s4369 + $0x2d9] sm:$0xff]
  %v5138 = vld [vmem:[%s4369 + $0x2e9] sm:$0xff]
  %v5139 = vld [vmem:[%s4369 + $0x2f1] sm:$0xff]
  %v5140 = vld [vmem:[%s4369 + $0x301] sm:$0xff]
  %v5141 = vld [vmem:[%s4369 + $0x309] sm:$0xff]
  %v5142 = vld [vmem:[%s4369 + $0x319] sm:$0xff]
  %v5143 = vld [vmem:[%s4369 + $0x321] sm:$0xff]
  %s5144 = scalar_lea.vmem %s1, 28
  %v5145 = vld [vmem:[%s5144] sm:$0xf]
  %v5147 = vsel %vm90, %v5080, 0
  %v5150 = vsel %vm90, %v5081, 0
  %v5153 = vsel %vm90, %v5082, 0
  %v5156 = vsel %vm90, %v5083, 0
  %v5159 = vsel %vm90, %v5084, 0
  %v5162 = vsel %vm90, %v5085, 0
  %v5165 = vsel %vm90, %v5086, 0
  %v5168 = vsel %vm90, %v5087, 0
  %v5171 = vsel %vm90, %v5088, 0
  %v5174 = vsel %vm90, %v5089, 0
  %v5177 = vsel %vm90, %v5090, 0
  %v5180 = vsel %vm90, %v5091, 0
  %v5183 = vsel %vm90, %v5092, 0
  %v5186 = vsel %vm90, %v5093, 0
  %v5189 = vsel %vm90, %v5094, 0
  %v5192 = vsel %vm90, %v5095, 0
  %v5195 = vsel %vm90, %v5096, 0
  %v5198 = vsel %vm90, %v5097, 0
  %v5201 = vsel %vm90, %v5098, 0
  %v5204 = vsel %vm90, %v5099, 0
  %v5207 = vsel %vm90, %v5100, 0
  %v5210 = vsel %vm90, %v5101, 0
  %v5213 = vsel %vm90, %v5102, 0
  %v5216 = vsel %vm90, %v5103, 0
  %v5219 = vsel %vm90, %v5104, 0
  %v5222 = vsel %vm90, %v5105, 0
  %v5225 = vsel %vm90, %v5106, 0
  %v5228 = vsel %vm90, %v5107, 0
  %v5231 = vsel %vm90, %v5108, 0
  %v5234 = vsel %vm90, %v5109, 0
  %v5237 = vsel %vm90, %v5110, 0
  %v5240 = vsel %vm90, %v5111, 0
  %v5243 = vsel %vm90, %v5112, 0
  %v5246 = vsel %vm90, %v5113, 0
  %v5249 = vsel %vm90, %v5114, 0
  %v5252 = vsel %vm90, %v5115, 0
  %v5255 = vsel %vm90, %v5116, 0
  %v5258 = vsel %vm90, %v5117, 0
  %v5261 = vsel %vm90, %v5118, 0
  %v5264 = vsel %vm90, %v5119, 0
  %v5267 = vsel %vm90, %v5120, 0
  %v5270 = vsel %vm90, %v5121, 0
  %v5273 = vsel %vm90, %v5122, 0
  %v5276 = vsel %vm90, %v5123, 0
  %v5279 = vsel %vm90, %v5124, 0
  %v5282 = vsel %vm90, %v5125, 0
  %v5285 = vsel %vm90, %v5126, 0
  %v5288 = vsel %vm90, %v5127, 0
  %v5291 = vsel %vm90, %v5128, 0
  %v5294 = vsel %vm90, %v5129, 0
  %v5297 = vsel %vm90, %v5130, 0
  %v5300 = vsel %vm90, %v5131, 0
  %v5303 = vsel %vm90, %v5132, 0
  %v5306 = vsel %vm90, %v5133, 0
  %v5309 = vsel %vm90, %v5134, 0
  %v5312 = vsel %vm90, %v5135, 0
  %v5315 = vsel %vm90, %v5136, 0
  %v5318 = vsel %vm90, %v5137, 0
  %v5321 = vsel %vm90, %v5138, 0
  %v5324 = vsel %vm90, %v5139, 0
  %v5327 = vsel %vm90, %v5140, 0
  %v5330 = vsel %vm90, %v5141, 0
  %v5333 = vsel %vm90, %v5142, 0
  %v5336 = vsel %vm90, %v5143, 0
  %v5339 = vsel %vm560, %v5145, 0
  %5341 = vmatprep.subr.mxu0 0.0
  %5342 = vmatpush1.msra.mxu0 %v5339
  %5343 = vmatprep.subr.mxu0 0.0
  %5344 = vmatpush1.msra.mxu0 0.0
  %5345 = vmatprep.subr.mxu0 0.0
  %5346 = vmatpush1.msra.mxu0 0.0
  %5347 = vmatprep.subr.mxu0 0.0
  %5348 = vmatpush1.msra.mxu0 0.0
  %5349 = vmatprep.subr.mxu0 0.0
  %5350 = vmatpush1.msra.mxu0 0.0
  %5351 = vmatprep.subr.mxu0 0.0
  %5352 = vmatpush1.msra.mxu0 0.0
  %5353 = vmatprep.subr.mxu0 0.0
  %5354 = vmatpush1.msra.mxu0 0.0
  %5355 = vmatprep.subr.mxu0 0.0
  %5356 = vmatpush1.msra.mxu0 0.0
  %5357 = vmatprep.subr.mxu0 0.0
  %5358 = vmatpush1.msra.mxu0 0.0
  %5359 = vmatprep.subr.mxu0 0.0
  %5360 = vmatpush1.msra.mxu0 0.0
  %5361 = vmatprep.subr.mxu0 0.0
  %5362 = vmatpush1.msra.mxu0 0.0
  %5363 = vmatprep.subr.mxu0 0.0
  %5364 = vmatpush1.msra.mxu0 0.0
  %5365 = vmatprep.subr.mxu0 0.0
  %5366 = vmatpush1.msra.mxu0 0.0
  %5367 = vmatprep.subr.mxu0 0.0
  %5368 = vmatpush1.msra.mxu0 0.0
  %5369 = vmatprep.subr.mxu0 0.0
  %5370 = vmatpush1.msra.mxu0 0.0
  %5371 = vmatprep.subr.mxu0 0.0
  %5372 = vmatpush1.msra.mxu0 0.0
  %5373 = vmatprep.subr.mxu0 0.0
  %5374 = vmatpush1.msra.mxu0 0.0
  %5375 = vmatprep.subr.mxu0 0.0
  %5376 = vmatpush1.msra.mxu0 0.0
  %5377 = vmatprep.subr.mxu0 0.0
  %5378 = vmatpush1.msra.mxu0 0.0
  %5379 = vmatprep.subr.mxu0 0.0
  %5380 = vmatpush1.msra.mxu0 0.0
  %5381 = vmatprep.subr.mxu0 0.0
  %5382 = vmatpush1.msra.mxu0 0.0
  %5383 = vmatprep.subr.mxu0 0.0
  %5384 = vmatpush1.msra.mxu0 0.0
  %5385 = vmatprep.subr.mxu0 0.0
  %5386 = vmatpush1.msra.mxu0 0.0
  %5387 = vmatprep.subr.mxu0 0.0
  %5388 = vmatpush1.msra.mxu0 0.0
  %5389 = vmatprep.subr.mxu0 0.0
  %5390 = vmatpush1.msra.mxu0 0.0
  %5391 = vmatprep.subr.mxu0 0.0
  %5392 = vmatpush1.msra.mxu0 0.0
  %5393 = vmatprep.subr.mxu0 0.0
  %5394 = vmatpush1.msra.mxu0 0.0
  %5395 = vmatprep.subr.mxu0 0.0
  %5396 = vmatpush1.msra.mxu0 0.0
  %5397 = vmatprep.subr.mxu0 0.0
  %5398 = vmatpush1.msra.mxu0 0.0
  %5399 = vmatprep.subr.mxu0 0.0
  %5400 = vmatpush1.msra.mxu0 0.0
  %5401 = vmatprep.subr.mxu0 0.0
  %5402 = vmatpush1.msra.mxu0 0.0
  %5403 = vmatprep.subr.mxu0 0.0
  %5404 = vmatpush1.msra.mxu0 0.0
  %5405 = vmatprep.mubr.f32.mxu0 0.0
  %5406 = vmatmul.mubr.f32.gmra.mrb[0].mxu0 %v5147
  %v5407 = vpop.f32.mrb[0].mxu0
  %v5408 = vadd.f32 0.0, %v5407
  %v5409 = vpop.f32.mrb[0].mxu0
  %5410 = vmatprep.mubr.f32.mxu0 0.0
  %5411 = vmatmul.mubr.f32.gmra.mrb[0].mxu0 %v5150
  %v5412 = vpop.f32.mrb[0].mxu0
  %v5413 = vadd.f32 0.0, %v5412
  %v5414 = vpop.f32.mrb[0].mxu0
  %5415 = vmatprep.mubr.f32.mxu0 0.0
  %5416 = vmatmul.mubr.f32.gmra.mrb[0].mxu0 %v5153
  %v5417 = vpop.f32.mrb[0].mxu0
  %v5418 = vadd.f32 0.0, %v5417
  %v5419 = vpop.f32.mrb[0].mxu0
  %5420 = vmatprep.mubr.f32.mxu0 0.0
  %5421 = vmatmul.mubr.f32.gmra.mrb[0].mxu0 %v5156
  %v5422 = vpop.f32.mrb[0].mxu0
  %v5423 = vadd.f32 0.0, %v5422
  %v5424 = vpop.f32.mrb[0].mxu0
  %5425 = vmatprep.mubr.f32.mxu0 0.0
  %5426 = vmatmul.mubr.f32.gmra.mrb[0].mxu0 %v5159
  %v5427 = vpop.f32.mrb[0].mxu0
  %v5428 = vadd.f32 0.0, %v5427
  %v5429 = vpop.f32.mrb[0].mxu0
  %5430 = vmatprep.mubr.f32.mxu0 0.0
  %5431 = vmatmul.mubr.f32.gmra.mrb[0].mxu0 %v5162
  %v5432 = vpop.f32.mrb[0].mxu0
  %v5433 = vadd.f32 0.0, %v5432
  %v5434 = vpop.f32.mrb[0].mxu0
  %5435 = vmatprep.mubr.f32.mxu0 0.0
  %5436 = vmatmul.mubr.f32.gmra.mrb[0].mxu0 %v5165
  %v5437 = vpop.f32.mrb[0].mxu0
  %v5438 = vadd.f32 0.0, %v5437
  %v5439 = vpop.f32.mrb[0].mxu0
  %5440 = vmatprep.mubr.f32.mxu0 0.0
  %5441 = vmatmul.mubr.f32.gmra.mrb[0].mxu0 %v5168
  %v5442 = vpop.f32.mrb[0].mxu0
  %v5443 = vadd.f32 0.0, %v5442
  %v5444 = vpop.f32.mrb[0].mxu0
  %5445 = vmatprep.mubr.f32.mxu0 0.0
  %5446 = vmatmul.mubr.f32.gmra.mrb[0].mxu0 %v5171
  %v5447 = vpop.f32.mrb[0].mxu0
  %v5448 = vadd.f32 0.0, %v5447
  %v5449 = vpop.f32.mrb[0].mxu0
  %5450 = vmatprep.mubr.f32.mxu0 0.0
  %5451 = vmatmul.mubr.f32.gmra.mrb[0].mxu0 %v5174
  %v5452 = vpop.f32.mrb[0].mxu0
  %v5453 = vadd.f32 0.0, %v5452
  %v5454 = vpop.f32.mrb[0].mxu0
  %5455 = vmatprep.mubr.f32.mxu0 0.0
  %5456 = vmatmul.mubr.f32.gmra.mrb[0].mxu0 %v5177
  %v5457 = vpop.f32.mrb[0].mxu0
  %v5458 = vadd.f32 0.0, %v5457
  %v5459 = vpop.f32.mrb[0].mxu0
  %5460 = vmatprep.mubr.f32.mxu0 0.0
  %5461 = vmatmul.mubr.f32.gmra.mrb[0].mxu0 %v5180
  %v5462 = vpop.f32.mrb[0].mxu0
  %v5463 = vadd.f32 0.0, %v5462
  %v5464 = vpop.f32.mrb[0].mxu0
  %5465 = vmatprep.mubr.f32.mxu0 0.0
  %5466 = vmatmul.mubr.f32.gmra.mrb[0].mxu0 %v5183
  %v5467 = vpop.f32.mrb[0].mxu0
  %v5468 = vadd.f32 0.0, %v5467
  %v5469 = vpop.f32.mrb[0].mxu0
  %5470 = vmatprep.mubr.f32.mxu0 0.0
  %5471 = vmatmul.mubr.f32.gmra.mrb[0].mxu0 %v5186
  %v5472 = vpop.f32.mrb[0].mxu0
  %v5473 = vadd.f32 0.0, %v5472
  %v5474 = vpop.f32.mrb[0].mxu0
  %5475 = vmatprep.mubr.f32.mxu0 0.0
  %5476 = vmatmul.mubr.f32.gmra.mrb[0].mxu0 %v5189
  %v5477 = vpop.f32.mrb[0].mxu0
  %v5478 = vadd.f32 0.0, %v5477
  %v5479 = vpop.f32.mrb[0].mxu0
  %5480 = vmatprep.mubr.f32.mxu0 0.0
  %5481 = vmatmul.mubr.f32.gmra.mrb[0].mxu0 %v5192
  %v5482 = vpop.f32.mrb[0].mxu0
  %v5483 = vadd.f32 0.0, %v5482
  %v5484 = vpop.f32.mrb[0].mxu0
  %5485 = vmatprep.mubr.f32.mxu0 0.0
  %5486 = vmatmul.mubr.f32.gmra.mrb[0].mxu0 %v5195
  %v5487 = vpop.f32.mrb[0].mxu0
  %v5488 = vadd.f32 0.0, %v5487
  %v5489 = vpop.f32.mrb[0].mxu0
  %5490 = vmatprep.mubr.f32.mxu0 0.0
  %5491 = vmatmul.mubr.f32.gmra.mrb[0].mxu0 %v5198
  %v5492 = vpop.f32.mrb[0].mxu0
  %v5493 = vadd.f32 0.0, %v5492
  %v5494 = vpop.f32.mrb[0].mxu0
  %5495 = vmatprep.mubr.f32.mxu0 0.0
  %5496 = vmatmul.mubr.f32.gmra.mrb[0].mxu0 %v5201
  %v5497 = vpop.f32.mrb[0].mxu0
  %v5498 = vadd.f32 0.0, %v5497
  %v5499 = vpop.f32.mrb[0].mxu0
  %5500 = vmatprep.mubr.f32.mxu0 0.0
  %5501 = vmatmul.mubr.f32.gmra.mrb[0].mxu0 %v5204
  %v5502 = vpop.f32.mrb[0].mxu0
  %v5503 = vadd.f32 0.0, %v5502
  %v5504 = vpop.f32.mrb[0].mxu0
  %5505 = vmatprep.mubr.f32.mxu0 0.0
  %5506 = vmatmul.mubr.f32.gmra.mrb[0].mxu0 %v5207
  %v5507 = vpop.f32.mrb[0].mxu0
  %v5508 = vadd.f32 0.0, %v5507
  %v5509 = vpop.f32.mrb[0].mxu0
  %5510 = vmatprep.mubr.f32.mxu0 0.0
  %5511 = vmatmul.mubr.f32.gmra.mrb[0].mxu0 %v5210
  %v5512 = vpop.f32.mrb[0].mxu0
  %v5513 = vadd.f32 0.0, %v5512
  %v5514 = vpop.f32.mrb[0].mxu0
  %5515 = vmatprep.mubr.f32.mxu0 0.0
  %5516 = vmatmul.mubr.f32.gmra.mrb[0].mxu0 %v5213
  %v5517 = vpop.f32.mrb[0].mxu0
  %v5518 = vadd.f32 0.0, %v5517
  %v5519 = vpop.f32.mrb[0].mxu0
  %5520 = vmatprep.mubr.f32.mxu0 0.0
  %5521 = vmatmul.mubr.f32.gmra.mrb[0].mxu0 %v5216
  %v5522 = vpop.f32.mrb[0].mxu0
  %v5523 = vadd.f32 0.0, %v5522
  %v5524 = vpop.f32.mrb[0].mxu0
  %5525 = vmatprep.mubr.f32.mxu0 0.0
  %5526 = vmatmul.mubr.f32.gmra.mrb[0].mxu0 %v5219
  %v5527 = vpop.f32.mrb[0].mxu0
  %v5528 = vadd.f32 0.0, %v5527
  %v5529 = vpop.f32.mrb[0].mxu0
  %5530 = vmatprep.mubr.f32.mxu0 0.0
  %5531 = vmatmul.mubr.f32.gmra.mrb[0].mxu0 %v5222
  %v5532 = vpop.f32.mrb[0].mxu0
  %v5533 = vadd.f32 0.0, %v5532
  %v5534 = vpop.f32.mrb[0].mxu0
  %5535 = vmatprep.mubr.f32.mxu0 0.0
  %5536 = vmatmul.mubr.f32.gmra.mrb[0].mxu0 %v5225
  %v5537 = vpop.f32.mrb[0].mxu0
  %v5538 = vadd.f32 0.0, %v5537
  %v5539 = vpop.f32.mrb[0].mxu0
  %5540 = vmatprep.mubr.f32.mxu0 0.0
  %5541 = vmatmul.mubr.f32.gmra.mrb[0].mxu0 %v5228
  %v5542 = vpop.f32.mrb[0].mxu0
  %v5543 = vadd.f32 0.0, %v5542
  %v5544 = vpop.f32.mrb[0].mxu0
  %5545 = vmatprep.mubr.f32.mxu0 0.0
  %5546 = vmatmul.mubr.f32.gmra.mrb[0].mxu0 %v5231
  %v5547 = vpop.f32.mrb[0].mxu0
  %v5548 = vadd.f32 0.0, %v5547
  %v5549 = vpop.f32.mrb[0].mxu0
  %5550 = vmatprep.mubr.f32.mxu0 0.0
  %5551 = vmatmul.mubr.f32.gmra.mrb[0].mxu0 %v5234
  %v5552 = vpop.f32.mrb[0].mxu0
  %v5553 = vadd.f32 0.0, %v5552
  %v5554 = vpop.f32.mrb[0].mxu0
  %5555 = vmatprep.mubr.f32.mxu0 0.0
  %5556 = vmatmul.mubr.f32.gmra.mrb[0].mxu0 %v5237
  %v5557 = vpop.f32.mrb[0].mxu0
  %v5558 = vadd.f32 0.0, %v5557
  %v5559 = vpop.f32.mrb[0].mxu0
  %5560 = vmatprep.mubr.f32.mxu0 0.0
  %5561 = vmatmul.mubr.f32.gmra.mrb[0].mxu0 %v5240
  %v5562 = vpop.f32.mrb[0].mxu0
  %v5563 = vadd.f32 0.0, %v5562
  %v5564 = vpop.f32.mrb[0].mxu0
  %5565 = vmatprep.mubr.f32.mxu0 0.0
  %5566 = vmatmul.mubr.f32.gmra.mrb[0].mxu0 %v5243
  %v5567 = vpop.f32.mrb[0].mxu0
  %v5568 = vadd.f32 0.0, %v5567
  %v5569 = vpop.f32.mrb[0].mxu0
  %5570 = vmatprep.mubr.f32.mxu0 0.0
  %5571 = vmatmul.mubr.f32.gmra.mrb[0].mxu0 %v5246
  %v5572 = vpop.f32.mrb[0].mxu0
  %v5573 = vadd.f32 0.0, %v5572
  %v5574 = vpop.f32.mrb[0].mxu0
  %5575 = vmatprep.mubr.f32.mxu0 0.0
  %5576 = vmatmul.mubr.f32.gmra.mrb[0].mxu0 %v5249
  %v5577 = vpop.f32.mrb[0].mxu0
  %v5578 = vadd.f32 0.0, %v5577
  %v5579 = vpop.f32.mrb[0].mxu0
  %5580 = vmatprep.mubr.f32.mxu0 0.0
  %5581 = vmatmul.mubr.f32.gmra.mrb[0].mxu0 %v5252
  %v5582 = vpop.f32.mrb[0].mxu0
  %v5583 = vadd.f32 0.0, %v5582
  %v5584 = vpop.f32.mrb[0].mxu0
  %5585 = vmatprep.mubr.f32.mxu0 0.0
  %5586 = vmatmul.mubr.f32.gmra.mrb[0].mxu0 %v5255
  %v5587 = vpop.f32.mrb[0].mxu0
  %v5588 = vadd.f32 0.0, %v5587
  %v5589 = vpop.f32.mrb[0].mxu0
  %5590 = vmatprep.mubr.f32.mxu0 0.0
  %5591 = vmatmul.mubr.f32.gmra.mrb[0].mxu0 %v5258
  %v5592 = vpop.f32.mrb[0].mxu0
  %v5593 = vadd.f32 0.0, %v5592
  %v5594 = vpop.f32.mrb[0].mxu0
  %5595 = vmatprep.mubr.f32.mxu0 0.0
  %5596 = vmatmul.mubr.f32.gmra.mrb[0].mxu0 %v5261
  %v5597 = vpop.f32.mrb[0].mxu0
  %v5598 = vadd.f32 0.0, %v5597
  %v5599 = vpop.f32.mrb[0].mxu0
  %5600 = vmatprep.mubr.f32.mxu0 0.0
  %5601 = vmatmul.mubr.f32.gmra.mrb[0].mxu0 %v5264
  %v5602 = vpop.f32.mrb[0].mxu0
  %v5603 = vadd.f32 0.0, %v5602
  %v5604 = vpop.f32.mrb[0].mxu0
  %5605 = vmatprep.mubr.f32.mxu0 0.0
  %5606 = vmatmul.mubr.f32.gmra.mrb[0].mxu0 %v5267
  %v5607 = vpop.f32.mrb[0].mxu0
  %v5608 = vadd.f32 0.0, %v5607
  %v5609 = vpop.f32.mrb[0].mxu0
  %5610 = vmatprep.mubr.f32.mxu0 0.0
  %5611 = vmatmul.mubr.f32.gmra.mrb[0].mxu0 %v5270
  %v5612 = vpop.f32.mrb[0].mxu0
  %v5613 = vadd.f32 0.0, %v5612
  %v5614 = vpop.f32.mrb[0].mxu0
  %5615 = vmatprep.mubr.f32.mxu0 0.0
  %5616 = vmatmul.mubr.f32.gmra.mrb[0].mxu0 %v5273
  %v5617 = vpop.f32.mrb[0].mxu0
  %v5618 = vadd.f32 0.0, %v5617
  %v5619 = vpop.f32.mrb[0].mxu0
  %5620 = vmatprep.mubr.f32.mxu0 0.0
  %5621 = vmatmul.mubr.f32.gmra.mrb[0].mxu0 %v5276
  %v5622 = vpop.f32.mrb[0].mxu0
  %v5623 = vadd.f32 0.0, %v5622
  %v5624 = vpop.f32.mrb[0].mxu0
  %5625 = vmatprep.mubr.f32.mxu0 0.0
  %5626 = vmatmul.mubr.f32.gmra.mrb[0].mxu0 %v5279
  %v5627 = vpop.f32.mrb[0].mxu0
  %v5628 = vadd.f32 0.0, %v5627
  %v5629 = vpop.f32.mrb[0].mxu0
  %5630 = vmatprep.mubr.f32.mxu0 0.0
  %5631 = vmatmul.mubr.f32.gmra.mrb[0].mxu0 %v5282
  %v5632 = vpop.f32.mrb[0].mxu0
  %v5633 = vadd.f32 0.0, %v5632
  %v5634 = vpop.f32.mrb[0].mxu0
  %5635 = vmatprep.mubr.f32.mxu0 0.0
  %5636 = vmatmul.mubr.f32.gmra.mrb[0].mxu0 %v5285
  %v5637 = vpop.f32.mrb[0].mxu0
  %v5638 = vadd.f32 0.0, %v5637
  %v5639 = vpop.f32.mrb[0].mxu0
  %5640 = vmatprep.mubr.f32.mxu0 0.0
  %5641 = vmatmul.mubr.f32.gmra.mrb[0].mxu0 %v5288
  %v5642 = vpop.f32.mrb[0].mxu0
  %v5643 = vadd.f32 0.0, %v5642
  %v5644 = vpop.f32.mrb[0].mxu0
  %5645 = vmatprep.mubr.f32.mxu0 0.0
  %5646 = vmatmul.mubr.f32.gmra.mrb[0].mxu0 %v5291
  %v5647 = vpop.f32.mrb[0].mxu0
  %v5648 = vadd.f32 0.0, %v5647
  %v5649 = vpop.f32.mrb[0].mxu0
  %5650 = vmatprep.mubr.f32.mxu0 0.0
  %5651 = vmatmul.mubr.f32.gmra.mrb[0].mxu0 %v5294
  %v5652 = vpop.f32.mrb[0].mxu0
  %v5653 = vadd.f32 0.0, %v5652
  %v5654 = vpop.f32.mrb[0].mxu0
  %5655 = vmatprep.mubr.f32.mxu0 0.0
  %5656 = vmatmul.mubr.f32.gmra.mrb[0].mxu0 %v5297
  %v5657 = vpop.f32.mrb[0].mxu0
  %v5658 = vadd.f32 0.0, %v5657
  %v5659 = vpop.f32.mrb[0].mxu0
  %5660 = vmatprep.mubr.f32.mxu0 0.0
  %5661 = vmatmul.mubr.f32.gmra.mrb[0].mxu0 %v5300
  %v5662 = vpop.f32.mrb[0].mxu0
  %v5663 = vadd.f32 0.0, %v5662
  %v5664 = vpop.f32.mrb[0].mxu0
  %5665 = vmatprep.mubr.f32.mxu0 0.0
  %5666 = vmatmul.mubr.f32.gmra.mrb[0].mxu0 %v5303
  %v5667 = vpop.f32.mrb[0].mxu0
  %v5668 = vadd.f32 0.0, %v5667
  %v5669 = vpop.f32.mrb[0].mxu0
  %5670 = vmatprep.mubr.f32.mxu0 0.0
  %5671 = vmatmul.mubr.f32.gmra.mrb[0].mxu0 %v5306
  %v5672 = vpop.f32.mrb[0].mxu0
  %v5673 = vadd.f32 0.0, %v5672
  %v5674 = vpop.f32.mrb[0].mxu0
  %5675 = vmatprep.mubr.f32.mxu0 0.0
  %5676 = vmatmul.mubr.f32.gmra.mrb[0].mxu0 %v5309
  %v5677 = vpop.f32.mrb[0].mxu0
  %v5678 = vadd.f32 0.0, %v5677
  %v5679 = vpop.f32.mrb[0].mxu0
  %5680 = vmatprep.mubr.f32.mxu0 0.0
  %5681 = vmatmul.mubr.f32.gmra.mrb[0].mxu0 %v5312
  %v5682 = vpop.f32.mrb[0].mxu0
  %v5683 = vadd.f32 0.0, %v5682
  %v5684 = vpop.f32.mrb[0].mxu0
  %5685 = vmatprep.mubr.f32.mxu0 0.0
  %5686 = vmatmul.mubr.f32.gmra.mrb[0].mxu0 %v5315
  %v5687 = vpop.f32.mrb[0].mxu0
  %v5688 = vadd.f32 0.0, %v5687
  %v5689 = vpop.f32.mrb[0].mxu0
  %5690 = vmatprep.mubr.f32.mxu0 0.0
  %5691 = vmatmul.mubr.f32.gmra.mrb[0].mxu0 %v5318
  %v5692 = vpop.f32.mrb[0].mxu0
  %v5693 = vadd.f32 0.0, %v5692
  %v5694 = vpop.f32.mrb[0].mxu0
  %5695 = vmatprep.mubr.f32.mxu0 0.0
  %5696 = vmatmul.mubr.f32.gmra.mrb[0].mxu0 %v5321
  %v5697 = vpop.f32.mrb[0].mxu0
  %v5698 = vadd.f32 0.0, %v5697
  %v5699 = vpop.f32.mrb[0].mxu0
  %5700 = vmatprep.mubr.f32.mxu0 0.0
  %5701 = vmatmul.mubr.f32.gmra.mrb[0].mxu0 %v5324
  %v5702 = vpop.f32.mrb[0].mxu0
  %v5703 = vadd.f32 0.0, %v5702
  %v5704 = vpop.f32.mrb[0].mxu0
  %5705 = vmatprep.mubr.f32.mxu0 0.0
  %5706 = vmatmul.mubr.f32.gmra.mrb[0].mxu0 %v5327
  %v5707 = vpop.f32.mrb[0].mxu0
  %v5708 = vadd.f32 0.0, %v5707
  %v5709 = vpop.f32.mrb[0].mxu0
  %5710 = vmatprep.mubr.f32.mxu0 0.0
  %5711 = vmatmul.mubr.f32.gmra.mrb[0].mxu0 %v5330
  %v5712 = vpop.f32.mrb[0].mxu0
  %v5713 = vadd.f32 0.0, %v5712
  %v5714 = vpop.f32.mrb[0].mxu0
  %5715 = vmatprep.mubr.f32.mxu0 0.0
  %5716 = vmatmul.mubr.f32.gmra.mrb[0].mxu0 %v5333
  %v5717 = vpop.f32.mrb[0].mxu0
  %v5718 = vadd.f32 0.0, %v5717
  %v5719 = vpop.f32.mrb[0].mxu0
  %5720 = vmatprep.mubr.f32.mxu0 0.0
  %5721 = vmatmul.mubr.f32.gmra.mrb[0].mxu0 %v5336
  %v5722 = vpop.f32.mrb[0].mxu0
  %v5723 = vadd.f32 0.0, %v5722
  %v5724 = vpop.f32.mrb[0].mxu0
  %5725 = vdwg.mxu0
  %v5726 = vadd.f32 %v5016, %v5408
  %v5727 = vadd.f32 %v5017, %v5413
  %v5728 = vadd.f32 %v5018, %v5418
  %v5729 = vadd.f32 %v5019, %v5423
  %v5730 = vadd.f32 %v5020, %v5428
  %v5731 = vadd.f32 %v5021, %v5433
  %v5732 = vadd.f32 %v5022, %v5438
  %v5733 = vadd.f32 %v5023, %v5443
  %v5734 = vadd.f32 %v5024, %v5448
  %v5735 = vadd.f32 %v5025, %v5453
  %v5736 = vadd.f32 %v5026, %v5458
  %v5737 = vadd.f32 %v5027, %v5463
  %v5738 = vadd.f32 %v5028, %v5468
  %v5739 = vadd.f32 %v5029, %v5473
  %v5740 = vadd.f32 %v5030, %v5478
  %v5741 = vadd.f32 %v5031, %v5483
  %v5742 = vadd.f32 %v5032, %v5488
  %v5743 = vadd.f32 %v5033, %v5493
  %v5744 = vadd.f32 %v5034, %v5498
  %v5745 = vadd.f32 %v5035, %v5503
  %v5746 = vadd.f32 %v5036, %v5508
  %v5747 = vadd.f32 %v5037, %v5513
  %v5748 = vadd.f32 %v5038, %v5518
  %v5749 = vadd.f32 %v5039, %v5523
  %v5750 = vadd.f32 %v5040, %v5528
  %v5751 = vadd.f32 %v5041, %v5533
  %v5752 = vadd.f32 %v5042, %v5538
  %v5753 = vadd.f32 %v5043, %v5543
  %v5754 = vadd.f32 %v5044, %v5548
  %v5755 = vadd.f32 %v5045, %v5553
  %v5756 = vadd.f32 %v5046, %v5558
  %v5757 = vadd.f32 %v5047, %v5563
  %v5758 = vadd.f32 %v5048, %v5568
  %v5759 = vadd.f32 %v5049, %v5573
  %v5760 = vadd.f32 %v5050, %v5578
  %v5761 = vadd.f32 %v5051, %v5583
  %v5762 = vadd.f32 %v5052, %v5588
  %v5763 = vadd.f32 %v5053, %v5593
  %v5764 = vadd.f32 %v5054, %v5598
  %v5765 = vadd.f32 %v5055, %v5603
  %v5766 = vadd.f32 %v5056, %v5608
  %v5767 = vadd.f32 %v5057, %v5613
  %v5768 = vadd.f32 %v5058, %v5618
  %v5769 = vadd.f32 %v5059, %v5623
  %v5770 = vadd.f32 %v5060, %v5628
  %v5771 = vadd.f32 %v5061, %v5633
  %v5772 = vadd.f32 %v5062, %v5638
  %v5773 = vadd.f32 %v5063, %v5643
  %v5774 = vadd.f32 %v5064, %v5648
  %v5775 = vadd.f32 %v5065, %v5653
  %v5776 = vadd.f32 %v5066, %v5658
  %v5777 = vadd.f32 %v5067, %v5663
  %v5778 = vadd.f32 %v5068, %v5668
  %v5779 = vadd.f32 %v5069, %v5673
  %v5780 = vadd.f32 %v5070, %v5678
  %v5781 = vadd.f32 %v5071, %v5683
  %v5782 = vadd.f32 %v5072, %v5688
  %v5783 = vadd.f32 %v5073, %v5693
  %v5784 = vadd.f32 %v5074, %v5698
  %v5785 = vadd.f32 %v5075, %v5703
  %v5786 = vadd.f32 %v5076, %v5708
  %v5787 = vadd.f32 %v5077, %v5713
  %v5788 = vadd.f32 %v5078, %v5718
  %v5789 = vadd.f32 %v5079, %v5723
  %v5790 = vld [vmem:[%s4369 + $0x2] sm:$0xff]
  %v5791 = vld [vmem:[%s4369 + $0xa] sm:$0xff]
  %v5792 = vld [vmem:[%s4369 + $0x1a] sm:$0xff]
  %v5793 = vld [vmem:[%s4369 + $0x22] sm:$0xff]
  %v5794 = vld [vmem:[%s4369 + $0x32] sm:$0xff]
  %v5795 = vld [vmem:[%s4369 + $0x3a] sm:$0xff]
  %v5796 = vld [vmem:[%s4369 + $0x4a] sm:$0xff]
  %v5797 = vld [vmem:[%s4369 + $0x52] sm:$0xff]
  %v5798 = vld [vmem:[%s4369 + $0x62] sm:$0xff]
  %v5799 = vld [vmem:[%s4369 + $0x6a] sm:$0xff]
  %v5800 = vld [vmem:[%s4369 + $0x7a] sm:$0xff]
  %v5801 = vld [vmem:[%s4369 + $0x82] sm:$0xff]
  %v5802 = vld [vmem:[%s4369 + $0x92] sm:$0xff]
  %v5803 = vld [vmem:[%s4369 + $0x9a] sm:$0xff]
  %v5804 = vld [vmem:[%s4369 + $0xaa] sm:$0xff]
  %v5805 = vld [vmem:[%s4369 + $0xb2] sm:$0xff]
  %v5806 = vld [vmem:[%s4369 + $0xc2] sm:$0xff]
  %v5807 = vld [vmem:[%s4369 + $0xca] sm:$0xff]
  %v5808 = vld [vmem:[%s4369 + $0xda] sm:$0xff]
  %v5809 = vld [vmem:[%s4369 + $0xe2] sm:$0xff]
  %v5810 = vld [vmem:[%s4369 + $0xf2] sm:$0xff]
  %v5811 = vld [vmem:[%s4369 + $0xfa] sm:$0xff]
  %v5812 = vld [vmem:[%s4369 + $0x10a] sm:$0xff]
  %v5813 = vld [vmem:[%s4369 + $0x112] sm:$0xff]
  %v5814 = vld [vmem:[%s4369 + $0x122] sm:$0xff]
  %v5815 = vld [vmem:[%s4369 + $0x12a] sm:$0xff]
  %v5816 = vld [vmem:[%s4369 + $0x13a] sm:$0xff]
  %v5817 = vld [vmem:[%s4369 + $0x142] sm:$0xff]
  %v5818 = vld [vmem:[%s4369 + $0x152] sm:$0xff]
  %v5819 = vld [vmem:[%s4369 + $0x15a] sm:$0xff]
  %v5820 = vld [vmem:[%s4369 + $0x16a] sm:$0xff]
  %v5821 = vld [vmem:[%s4369 + $0x172] sm:$0xff]
  %v5822 = vld [vmem:[%s4369 + $0x1b2] sm:$0xff]
  %v5823 = vld [vmem:[%s4369 + $0x1ba] sm:$0xff]
  %v5824 = vld [vmem:[%s4369 + $0x1ca] sm:$0xff]
  %v5825 = vld [vmem:[%s4369 + $0x1d2] sm:$0xff]
  %v5826 = vld [vmem:[%s4369 + $0x1e2] sm:$0xff]
  %v5827 = vld [vmem:[%s4369 + $0x1ea] sm:$0xff]
  %v5828 = vld [vmem:[%s4369 + $0x1fa] sm:$0xff]
  %v5829 = vld [vmem:[%s4369 + $0x202] sm:$0xff]
  %v5830 = vld [vmem:[%s4369 + $0x212] sm:$0xff]
  %v5831 = vld [vmem:[%s4369 + $0x21a] sm:$0xff]
  %v5832 = vld [vmem:[%s4369 + $0x22a] sm:$0xff]
  %v5833 = vld [vmem:[%s4369 + $0x232] sm:$0xff]
  %v5834 = vld [vmem:[%s4369 + $0x242] sm:$0xff]
  %v5835 = vld [vmem:[%s4369 + $0x24a] sm:$0xff]
  %v5836 = vld [vmem:[%s4369 + $0x25a] sm:$0xff]
  %v5837 = vld [vmem:[%s4369 + $0x262] sm:$0xff]
  %v5838 = vld [vmem:[%s4369 + $0x272] sm:$0xff]
  %v5839 = vld [vmem:[%s4369 + $0x27a] sm:$0xff]
  %v5840 = vld [vmem:[%s4369 + $0x28a] sm:$0xff]
  %v5841 = vld [vmem:[%s4369 + $0x292] sm:$0xff]
  %v5842 = vld [vmem:[%s4369 + $0x2a2] sm:$0xff]
  %v5843 = vld [vmem:[%s4369 + $0x2aa] sm:$0xff]
  %v5844 = vld [vmem:[%s4369 + $0x2ba] sm:$0xff]
  %v5845 = vld [vmem:[%s4369 + $0x2c2] sm:$0xff]
  %v5846 = vld [vmem:[%s4369 + $0x2d2] sm:$0xff]
  %v5847 = vld [vmem:[%s4369 + $0x2da] sm:$0xff]
  %v5848 = vld [vmem:[%s4369 + $0x2ea] sm:$0xff]
  %v5849 = vld [vmem:[%s4369 + $0x2f2] sm:$0xff]
  %v5850 = vld [vmem:[%s4369 + $0x302] sm:$0xff]
  %v5851 = vld [vmem:[%s4369 + $0x30a] sm:$0xff]
  %v5852 = vld [vmem:[%s4369 + $0x31a] sm:$0xff]
  %v5853 = vld [vmem:[%s4369 + $0x322] sm:$0xff]
  %s5854 = scalar_lea.vmem %s1, 32
  %v5855 = vld [vmem:[%s5854] sm:$0xf]
  %v5857 = vsel %vm90, %v5790, 0
  %v5860 = vsel %vm90, %v5791, 0
  %v5863 = vsel %vm90, %v5792, 0
  %v5866 = vsel %vm90, %v5793, 0
  %v5869 = vsel %vm90, %v5794, 0
  %v5872 = vsel %vm90, %v5795, 0
  %v5875 = vsel %vm90, %v5796, 0
  %v5878 = vsel %vm90, %v5797, 0
  %v5881 = vsel %vm90, %v5798, 0
  %v5884 = vsel %vm90, %v5799, 0
  %v5887 = vsel %vm90, %v5800, 0
  %v5890 = vsel %vm90, %v5801, 0
  %v5893 = vsel %vm90, %v5802, 0
  %v5896 = vsel %vm90, %v5803, 0
  %v5899 = vsel %vm90, %v5804, 0
  %v5902 = vsel %vm90, %v5805, 0
  %v5905 = vsel %vm90, %v5806, 0
  %v5908 = vsel %vm90, %v5807, 0
  %v5911 = vsel %vm90, %v5808, 0
  %v5914 = vsel %vm90, %v5809, 0
  %v5917 = vsel %vm90, %v5810, 0
  %v5920 = vsel %vm90, %v5811, 0
  %v5923 = vsel %vm90, %v5812, 0
  %v5926 = vsel %vm90, %v5813, 0
  %v5929 = vsel %vm90, %v5814, 0
  %v5932 = vsel %vm90, %v5815, 0
  %v5935 = vsel %vm90, %v5816, 0
  %v5938 = vsel %vm90, %v5817, 0
  %v5941 = vsel %vm90, %v5818, 0
  %v5944 = vsel %vm90, %v5819, 0
  %v5947 = vsel %vm90, %v5820, 0
  %v5950 = vsel %vm90, %v5821, 0
  %v5953 = vsel %vm90, %v5822, 0
  %v5956 = vsel %vm90, %v5823, 0
  %v5959 = vsel %vm90, %v5824, 0
  %v5962 = vsel %vm90, %v5825, 0
  %v5965 = vsel %vm90, %v5826, 0
  %v5968 = vsel %vm90, %v5827, 0
  %v5971 = vsel %vm90, %v5828, 0
  %v5974 = vsel %vm90, %v5829, 0
  %v5977 = vsel %vm90, %v5830, 0
  %v5980 = vsel %vm90, %v5831, 0
  %v5983 = vsel %vm90, %v5832, 0
  %v5986 = vsel %vm90, %v5833, 0
  %v5989 = vsel %vm90, %v5834, 0
  %v5992 = vsel %vm90, %v5835, 0
  %v5995 = vsel %vm90, %v5836, 0
  %v5998 = vsel %vm90, %v5837, 0
  %v6001 = vsel %vm90, %v5838, 0
  %v6004 = vsel %vm90, %v5839, 0
  %v6007 = vsel %vm90, %v5840, 0
  %v6010 = vsel %vm90, %v5841, 0
  %v6013 = vsel %vm90, %v5842, 0
  %v6016 = vsel %vm90, %v5843, 0
  %v6019 = vsel %vm90, %v5844, 0
  %v6022 = vsel %vm90, %v5845, 0
  %v6025 = vsel %vm90, %v5846, 0
  %v6028 = vsel %vm90, %v5847, 0
  %v6031 = vsel %vm90, %v5848, 0
  %v6034 = vsel %vm90, %v5849, 0
  %v6037 = vsel %vm90, %v5850, 0
  %v6040 = vsel %vm90, %v5851, 0
  %v6043 = vsel %vm90, %v5852, 0
  %v6046 = vsel %vm90, %v5853, 0
  %v6049 = vsel %vm560, %v5855, 0
  %6051 = vmatprep.subr.mxu0 0.0
  %6052 = vmatpush1.msra.mxu0 %v6049
  %6053 = vmatprep.subr.mxu0 0.0
  %6054 = vmatpush1.msra.mxu0 0.0
  %6055 = vmatprep.subr.mxu0 0.0
  %6056 = vmatpush1.msra.mxu0 0.0
  %6057 = vmatprep.subr.mxu0 0.0
  %6058 = vmatpush1.msra.mxu0 0.0
  %6059 = vmatprep.subr.mxu0 0.0
  %6060 = vmatpush1.msra.mxu0 0.0
  %6061 = vmatprep.subr.mxu0 0.0
  %6062 = vmatpush1.msra.mxu0 0.0
  %6063 = vmatprep.subr.mxu0 0.0
  %6064 = vmatpush1.msra.mxu0 0.0
  %6065 = vmatprep.subr.mxu0 0.0
  %6066 = vmatpush1.msra.mxu0 0.0
  %6067 = vmatprep.subr.mxu0 0.0
  %6068 = vmatpush1.msra.mxu0 0.0
  %6069 = vmatprep.subr.mxu0 0.0
  %6070 = vmatpush1.msra.mxu0 0.0
  %6071 = vmatprep.subr.mxu0 0.0
  %6072 = vmatpush1.msra.mxu0 0.0
  %6073 = vmatprep.subr.mxu0 0.0
  %6074 = vmatpush1.msra.mxu0 0.0
  %6075 = vmatprep.subr.mxu0 0.0
  %6076 = vmatpush1.msra.mxu0 0.0
  %6077 = vmatprep.subr.mxu0 0.0
  %6078 = vmatpush1.msra.mxu0 0.0
  %6079 = vmatprep.subr.mxu0 0.0
  %6080 = vmatpush1.msra.mxu0 0.0
  %6081 = vmatprep.subr.mxu0 0.0
  %6082 = vmatpush1.msra.mxu0 0.0
  %6083 = vmatprep.subr.mxu0 0.0
  %6084 = vmatpush1.msra.mxu0 0.0
  %6085 = vmatprep.subr.mxu0 0.0
  %6086 = vmatpush1.msra.mxu0 0.0
  %6087 = vmatprep.subr.mxu0 0.0
  %6088 = vmatpush1.msra.mxu0 0.0
  %6089 = vmatprep.subr.mxu0 0.0
  %6090 = vmatpush1.msra.mxu0 0.0
  %6091 = vmatprep.subr.mxu0 0.0
  %6092 = vmatpush1.msra.mxu0 0.0
  %6093 = vmatprep.subr.mxu0 0.0
  %6094 = vmatpush1.msra.mxu0 0.0
  %6095 = vmatprep.subr.mxu0 0.0
  %6096 = vmatpush1.msra.mxu0 0.0
  %6097 = vmatprep.subr.mxu0 0.0
  %6098 = vmatpush1.msra.mxu0 0.0
  %6099 = vmatprep.subr.mxu0 0.0
  %6100 = vmatpush1.msra.mxu0 0.0
  %6101 = vmatprep.subr.mxu0 0.0
  %6102 = vmatpush1.msra.mxu0 0.0
  %6103 = vmatprep.subr.mxu0 0.0
  %6104 = vmatpush1.msra.mxu0 0.0
  %6105 = vmatprep.subr.mxu0 0.0
  %6106 = vmatpush1.msra.mxu0 0.0
  %6107 = vmatprep.subr.mxu0 0.0
  %6108 = vmatpush1.msra.mxu0 0.0
  %6109 = vmatprep.subr.mxu0 0.0
  %6110 = vmatpush1.msra.mxu0 0.0
  %6111 = vmatprep.subr.mxu0 0.0
  %6112 = vmatpush1.msra.mxu0 0.0
  %6113 = vmatprep.subr.mxu0 0.0
  %6114 = vmatpush1.msra.mxu0 0.0
  %6115 = vmatprep.mubr.f32.mxu0 0.0
  %6116 = vmatmul.mubr.f32.gmra.mrb[0].mxu0 %v5857
  %v6117 = vpop.f32.mrb[0].mxu0
  %v6118 = vadd.f32 0.0, %v6117
  %v6119 = vpop.f32.mrb[0].mxu0
  %6120 = vmatprep.mubr.f32.mxu0 0.0
  %6121 = vmatmul.mubr.f32.gmra.mrb[0].mxu0 %v5860
  %v6122 = vpop.f32.mrb[0].mxu0
  %v6123 = vadd.f32 0.0, %v6122
  %v6124 = vpop.f32.mrb[0].mxu0
  %6125 = vmatprep.mubr.f32.mxu0 0.0
  %6126 = vmatmul.mubr.f32.gmra.mrb[0].mxu0 %v5863
  %v6127 = vpop.f32.mrb[0].mxu0
  %v6128 = vadd.f32 0.0, %v6127
  %v6129 = vpop.f32.mrb[0].mxu0
  %6130 = vmatprep.mubr.f32.mxu0 0.0
  %6131 = vmatmul.mubr.f32.gmra.mrb[0].mxu0 %v5866
  %v6132 = vpop.f32.mrb[0].mxu0
  %v6133 = vadd.f32 0.0, %v6132
  %v6134 = vpop.f32.mrb[0].mxu0
  %6135 = vmatprep.mubr.f32.mxu0 0.0
  %6136 = vmatmul.mubr.f32.gmra.mrb[0].mxu0 %v5869
  %v6137 = vpop.f32.mrb[0].mxu0
  %v6138 = vadd.f32 0.0, %v6137
  %v6139 = vpop.f32.mrb[0].mxu0
  %6140 = vmatprep.mubr.f32.mxu0 0.0
  %6141 = vmatmul.mubr.f32.gmra.mrb[0].mxu0 %v5872
  %v6142 = vpop.f32.mrb[0].mxu0
  %v6143 = vadd.f32 0.0, %v6142
  %v6144 = vpop.f32.mrb[0].mxu0
  %6145 = vmatprep.mubr.f32.mxu0 0.0
  %6146 = vmatmul.mubr.f32.gmra.mrb[0].mxu0 %v5875
  %v6147 = vpop.f32.mrb[0].mxu0
  %v6148 = vadd.f32 0.0, %v6147
  %v6149 = vpop.f32.mrb[0].mxu0
  %6150 = vmatprep.mubr.f32.mxu0 0.0
  %6151 = vmatmul.mubr.f32.gmra.mrb[0].mxu0 %v5878
  %v6152 = vpop.f32.mrb[0].mxu0
  %v6153 = vadd.f32 0.0, %v6152
  %v6154 = vpop.f32.mrb[0].mxu0
  %6155 = vmatprep.mubr.f32.mxu0 0.0
  %6156 = vmatmul.mubr.f32.gmra.mrb[0].mxu0 %v5881
  %v6157 = vpop.f32.mrb[0].mxu0
  %v6158 = vadd.f32 0.0, %v6157
  %v6159 = vpop.f32.mrb[0].mxu0
  %6160 = vmatprep.mubr.f32.mxu0 0.0
  %6161 = vmatmul.mubr.f32.gmra.mrb[0].mxu0 %v5884
  %v6162 = vpop.f32.mrb[0].mxu0
  %v6163 = vadd.f32 0.0, %v6162
  %v6164 = vpop.f32.mrb[0].mxu0
  %6165 = vmatprep.mubr.f32.mxu0 0.0
  %6166 = vmatmul.mubr.f32.gmra.mrb[0].mxu0 %v5887
  %v6167 = vpop.f32.mrb[0].mxu0
  %v6168 = vadd.f32 0.0, %v6167
  %v6169 = vpop.f32.mrb[0].mxu0
  %6170 = vmatprep.mubr.f32.mxu0 0.0
  %6171 = vmatmul.mubr.f32.gmra.mrb[0].mxu0 %v5890
  %v6172 = vpop.f32.mrb[0].mxu0
  %v6173 = vadd.f32 0.0, %v6172
  %v6174 = vpop.f32.mrb[0].mxu0
  %6175 = vmatprep.mubr.f32.mxu0 0.0
  %6176 = vmatmul.mubr.f32.gmra.mrb[0].mxu0 %v5893
  %v6177 = vpop.f32.mrb[0].mxu0
  %v6178 = vadd.f32 0.0, %v6177
  %v6179 = vpop.f32.mrb[0].mxu0
  %6180 = vmatprep.mubr.f32.mxu0 0.0
  %6181 = vmatmul.mubr.f32.gmra.mrb[0].mxu0 %v5896
  %v6182 = vpop.f32.mrb[0].mxu0
  %v6183 = vadd.f32 0.0, %v6182
  %v6184 = vpop.f32.mrb[0].mxu0
  %6185 = vmatprep.mubr.f32.mxu0 0.0
  %6186 = vmatmul.mubr.f32.gmra.mrb[0].mxu0 %v5899
  %v6187 = vpop.f32.mrb[0].mxu0
  %v6188 = vadd.f32 0.0, %v6187
  %v6189 = vpop.f32.mrb[0].mxu0
  %6190 = vmatprep.mubr.f32.mxu0 0.0
  %6191 = vmatmul.mubr.f32.gmra.mrb[0].mxu0 %v5902
  %v6192 = vpop.f32.mrb[0].mxu0
  %v6193 = vadd.f32 0.0, %v6192
  %v6194 = vpop.f32.mrb[0].mxu0
  %6195 = vmatprep.mubr.f32.mxu0 0.0
  %6196 = vmatmul.mubr.f32.gmra.mrb[0].mxu0 %v5905
  %v6197 = vpop.f32.mrb[0].mxu0
  %v6198 = vadd.f32 0.0, %v6197
  %v6199 = vpop.f32.mrb[0].mxu0
  %6200 = vmatprep.mubr.f32.mxu0 0.0
  %6201 = vmatmul.mubr.f32.gmra.mrb[0].mxu0 %v5908
  %v6202 = vpop.f32.mrb[0].mxu0
  %v6203 = vadd.f32 0.0, %v6202
  %v6204 = vpop.f32.mrb[0].mxu0
  %6205 = vmatprep.mubr.f32.mxu0 0.0
  %6206 = vmatmul.mubr.f32.gmra.mrb[0].mxu0 %v5911
  %v6207 = vpop.f32.mrb[0].mxu0
  %v6208 = vadd.f32 0.0, %v6207
  %v6209 = vpop.f32.mrb[0].mxu0
  %6210 = vmatprep.mubr.f32.mxu0 0.0
  %6211 = vmatmul.mubr.f32.gmra.mrb[0].mxu0 %v5914
  %v6212 = vpop.f32.mrb[0].mxu0
  %v6213 = vadd.f32 0.0, %v6212
  %v6214 = vpop.f32.mrb[0].mxu0
  %6215 = vmatprep.mubr.f32.mxu0 0.0
  %6216 = vmatmul.mubr.f32.gmra.mrb[0].mxu0 %v5917
  %v6217 = vpop.f32.mrb[0].mxu0
  %v6218 = vadd.f32 0.0, %v6217
  %v6219 = vpop.f32.mrb[0].mxu0
  %6220 = vmatprep.mubr.f32.mxu0 0.0
  %6221 = vmatmul.mubr.f32.gmra.mrb[0].mxu0 %v5920
  %v6222 = vpop.f32.mrb[0].mxu0
  %v6223 = vadd.f32 0.0, %v6222
  %v6224 = vpop.f32.mrb[0].mxu0
  %6225 = vmatprep.mubr.f32.mxu0 0.0
  %6226 = vmatmul.mubr.f32.gmra.mrb[0].mxu0 %v5923
  %v6227 = vpop.f32.mrb[0].mxu0
  %v6228 = vadd.f32 0.0, %v6227
  %v6229 = vpop.f32.mrb[0].mxu0
  %6230 = vmatprep.mubr.f32.mxu0 0.0
  %6231 = vmatmul.mubr.f32.gmra.mrb[0].mxu0 %v5926
  %v6232 = vpop.f32.mrb[0].mxu0
  %v6233 = vadd.f32 0.0, %v6232
  %v6234 = vpop.f32.mrb[0].mxu0
  %6235 = vmatprep.mubr.f32.mxu0 0.0
  %6236 = vmatmul.mubr.f32.gmra.mrb[0].mxu0 %v5929
  %v6237 = vpop.f32.mrb[0].mxu0
  %v6238 = vadd.f32 0.0, %v6237
  %v6239 = vpop.f32.mrb[0].mxu0
  %6240 = vmatprep.mubr.f32.mxu0 0.0
  %6241 = vmatmul.mubr.f32.gmra.mrb[0].mxu0 %v5932
  %v6242 = vpop.f32.mrb[0].mxu0
  %v6243 = vadd.f32 0.0, %v6242
  %v6244 = vpop.f32.mrb[0].mxu0
  %6245 = vmatprep.mubr.f32.mxu0 0.0
  %6246 = vmatmul.mubr.f32.gmra.mrb[0].mxu0 %v5935
  %v6247 = vpop.f32.mrb[0].mxu0
  %v6248 = vadd.f32 0.0, %v6247
  %v6249 = vpop.f32.mrb[0].mxu0
  %6250 = vmatprep.mubr.f32.mxu0 0.0
  %6251 = vmatmul.mubr.f32.gmra.mrb[0].mxu0 %v5938
  %v6252 = vpop.f32.mrb[0].mxu0
  %v6253 = vadd.f32 0.0, %v6252
  %v6254 = vpop.f32.mrb[0].mxu0
  %6255 = vmatprep.mubr.f32.mxu0 0.0
  %6256 = vmatmul.mubr.f32.gmra.mrb[0].mxu0 %v5941
  %v6257 = vpop.f32.mrb[0].mxu0
  %v6258 = vadd.f32 0.0, %v6257
  %v6259 = vpop.f32.mrb[0].mxu0
  %6260 = vmatprep.mubr.f32.mxu0 0.0
  %6261 = vmatmul.mubr.f32.gmra.mrb[0].mxu0 %v5944
  %v6262 = vpop.f32.mrb[0].mxu0
  %v6263 = vadd.f32 0.0, %v6262
  %v6264 = vpop.f32.mrb[0].mxu0
  %6265 = vmatprep.mubr.f32.mxu0 0.0
  %6266 = vmatmul.mubr.f32.gmra.mrb[0].mxu0 %v5947
  %v6267 = vpop.f32.mrb[0].mxu0
  %v6268 = vadd.f32 0.0, %v6267
  %v6269 = vpop.f32.mrb[0].mxu0
  %6270 = vmatprep.mubr.f32.mxu0 0.0
  %6271 = vmatmul.mubr.f32.gmra.mrb[0].mxu0 %v5950
  %v6272 = vpop.f32.mrb[0].mxu0
  %v6273 = vadd.f32 0.0, %v6272
  %v6274 = vpop.f32.mrb[0].mxu0
  %6275 = vmatprep.mubr.f32.mxu0 0.0
  %6276 = vmatmul.mubr.f32.gmra.mrb[0].mxu0 %v5953
  %v6277 = vpop.f32.mrb[0].mxu0
  %v6278 = vadd.f32 0.0, %v6277
  %v6279 = vpop.f32.mrb[0].mxu0
  %6280 = vmatprep.mubr.f32.mxu0 0.0
  %6281 = vmatmul.mubr.f32.gmra.mrb[0].mxu0 %v5956
  %v6282 = vpop.f32.mrb[0].mxu0
  %v6283 = vadd.f32 0.0, %v6282
  %v6284 = vpop.f32.mrb[0].mxu0
  %6285 = vmatprep.mubr.f32.mxu0 0.0
  %6286 = vmatmul.mubr.f32.gmra.mrb[0].mxu0 %v5959
  %v6287 = vpop.f32.mrb[0].mxu0
  %v6288 = vadd.f32 0.0, %v6287
  %v6289 = vpop.f32.mrb[0].mxu0
  %6290 = vmatprep.mubr.f32.mxu0 0.0
  %6291 = vmatmul.mubr.f32.gmra.mrb[0].mxu0 %v5962
  %v6292 = vpop.f32.mrb[0].mxu0
  %v6293 = vadd.f32 0.0, %v6292
  %v6294 = vpop.f32.mrb[0].mxu0
  %6295 = vmatprep.mubr.f32.mxu0 0.0
  %6296 = vmatmul.mubr.f32.gmra.mrb[0].mxu0 %v5965
  %v6297 = vpop.f32.mrb[0].mxu0
  %v6298 = vadd.f32 0.0, %v6297
  %v6299 = vpop.f32.mrb[0].mxu0
  %6300 = vmatprep.mubr.f32.mxu0 0.0
  %6301 = vmatmul.mubr.f32.gmra.mrb[0].mxu0 %v5968
  %v6302 = vpop.f32.mrb[0].mxu0
  %v6303 = vadd.f32 0.0, %v6302
  %v6304 = vpop.f32.mrb[0].mxu0
  %6305 = vmatprep.mubr.f32.mxu0 0.0
  %6306 = vmatmul.mubr.f32.gmra.mrb[0].mxu0 %v5971
  %v6307 = vpop.f32.mrb[0].mxu0
  %v6308 = vadd.f32 0.0, %v6307
  %v6309 = vpop.f32.mrb[0].mxu0
  %6310 = vmatprep.mubr.f32.mxu0 0.0
  %6311 = vmatmul.mubr.f32.gmra.mrb[0].mxu0 %v5974
  %v6312 = vpop.f32.mrb[0].mxu0
  %v6313 = vadd.f32 0.0, %v6312
  %v6314 = vpop.f32.mrb[0].mxu0
  %6315 = vmatprep.mubr.f32.mxu0 0.0
  %6316 = vmatmul.mubr.f32.gmra.mrb[0].mxu0 %v5977
  %v6317 = vpop.f32.mrb[0].mxu0
  %v6318 = vadd.f32 0.0, %v6317
  %v6319 = vpop.f32.mrb[0].mxu0
  %6320 = vmatprep.mubr.f32.mxu0 0.0
  %6321 = vmatmul.mubr.f32.gmra.mrb[0].mxu0 %v5980
  %v6322 = vpop.f32.mrb[0].mxu0
  %v6323 = vadd.f32 0.0, %v6322
  %v6324 = vpop.f32.mrb[0].mxu0
  %6325 = vmatprep.mubr.f32.mxu0 0.0
  %6326 = vmatmul.mubr.f32.gmra.mrb[0].mxu0 %v5983
  %v6327 = vpop.f32.mrb[0].mxu0
  %v6328 = vadd.f32 0.0, %v6327
  %v6329 = vpop.f32.mrb[0].mxu0
  %6330 = vmatprep.mubr.f32.mxu0 0.0
  %6331 = vmatmul.mubr.f32.gmra.mrb[0].mxu0 %v5986
  %v6332 = vpop.f32.mrb[0].mxu0
  %v6333 = vadd.f32 0.0, %v6332
  %v6334 = vpop.f32.mrb[0].mxu0
  %6335 = vmatprep.mubr.f32.mxu0 0.0
  %6336 = vmatmul.mubr.f32.gmra.mrb[0].mxu0 %v5989
  %v6337 = vpop.f32.mrb[0].mxu0
  %v6338 = vadd.f32 0.0, %v6337
  %v6339 = vpop.f32.mrb[0].mxu0
  %6340 = vmatprep.mubr.f32.mxu0 0.0
  %6341 = vmatmul.mubr.f32.gmra.mrb[0].mxu0 %v5992
  %v6342 = vpop.f32.mrb[0].mxu0
  %v6343 = vadd.f32 0.0, %v6342
  %v6344 = vpop.f32.mrb[0].mxu0
  %6345 = vmatprep.mubr.f32.mxu0 0.0
  %6346 = vmatmul.mubr.f32.gmra.mrb[0].mxu0 %v5995
  %v6347 = vpop.f32.mrb[0].mxu0
  %v6348 = vadd.f32 0.0, %v6347
  %v6349 = vpop.f32.mrb[0].mxu0
  %6350 = vmatprep.mubr.f32.mxu0 0.0
  %6351 = vmatmul.mubr.f32.gmra.mrb[0].mxu0 %v5998
  %v6352 = vpop.f32.mrb[0].mxu0
  %v6353 = vadd.f32 0.0, %v6352
  %v6354 = vpop.f32.mrb[0].mxu0
  %6355 = vmatprep.mubr.f32.mxu0 0.0
  %6356 = vmatmul.mubr.f32.gmra.mrb[0].mxu0 %v6001
  %v6357 = vpop.f32.mrb[0].mxu0
  %v6358 = vadd.f32 0.0, %v6357
  %v6359 = vpop.f32.mrb[0].mxu0
  %6360 = vmatprep.mubr.f32.mxu0 0.0
  %6361 = vmatmul.mubr.f32.gmra.mrb[0].mxu0 %v6004
  %v6362 = vpop.f32.mrb[0].mxu0
  %v6363 = vadd.f32 0.0, %v6362
  %v6364 = vpop.f32.mrb[0].mxu0
  %6365 = vmatprep.mubr.f32.mxu0 0.0
  %6366 = vmatmul.mubr.f32.gmra.mrb[0].mxu0 %v6007
  %v6367 = vpop.f32.mrb[0].mxu0
  %v6368 = vadd.f32 0.0, %v6367
  %v6369 = vpop.f32.mrb[0].mxu0
  %6370 = vmatprep.mubr.f32.mxu0 0.0
  %6371 = vmatmul.mubr.f32.gmra.mrb[0].mxu0 %v6010
  %v6372 = vpop.f32.mrb[0].mxu0
  %v6373 = vadd.f32 0.0, %v6372
  %v6374 = vpop.f32.mrb[0].mxu0
  %6375 = vmatprep.mubr.f32.mxu0 0.0
  %6376 = vmatmul.mubr.f32.gmra.mrb[0].mxu0 %v6013
  %v6377 = vpop.f32.mrb[0].mxu0
  %v6378 = vadd.f32 0.0, %v6377
  %v6379 = vpop.f32.mrb[0].mxu0
  %6380 = vmatprep.mubr.f32.mxu0 0.0
  %6381 = vmatmul.mubr.f32.gmra.mrb[0].mxu0 %v6016
  %v6382 = vpop.f32.mrb[0].mxu0
  %v6383 = vadd.f32 0.0, %v6382
  %v6384 = vpop.f32.mrb[0].mxu0
  %6385 = vmatprep.mubr.f32.mxu0 0.0
  %6386 = vmatmul.mubr.f32.gmra.mrb[0].mxu0 %v6019
  %v6387 = vpop.f32.mrb[0].mxu0
  %v6388 = vadd.f32 0.0, %v6387
  %v6389 = vpop.f32.mrb[0].mxu0
  %6390 = vmatprep.mubr.f32.mxu0 0.0
  %6391 = vmatmul.mubr.f32.gmra.mrb[0].mxu0 %v6022
  %v6392 = vpop.f32.mrb[0].mxu0
  %v6393 = vadd.f32 0.0, %v6392
  %v6394 = vpop.f32.mrb[0].mxu0
  %6395 = vmatprep.mubr.f32.mxu0 0.0
  %6396 = vmatmul.mubr.f32.gmra.mrb[0].mxu0 %v6025
  %v6397 = vpop.f32.mrb[0].mxu0
  %v6398 = vadd.f32 0.0, %v6397
  %v6399 = vpop.f32.mrb[0].mxu0
  %6400 = vmatprep.mubr.f32.mxu0 0.0
  %6401 = vmatmul.mubr.f32.gmra.mrb[0].mxu0 %v6028
  %v6402 = vpop.f32.mrb[0].mxu0
  %v6403 = vadd.f32 0.0, %v6402
  %v6404 = vpop.f32.mrb[0].mxu0
  %6405 = vmatprep.mubr.f32.mxu0 0.0
  %6406 = vmatmul.mubr.f32.gmra.mrb[0].mxu0 %v6031
  %v6407 = vpop.f32.mrb[0].mxu0
  %v6408 = vadd.f32 0.0, %v6407
  %v6409 = vpop.f32.mrb[0].mxu0
  %6410 = vmatprep.mubr.f32.mxu0 0.0
  %6411 = vmatmul.mubr.f32.gmra.mrb[0].mxu0 %v6034
  %v6412 = vpop.f32.mrb[0].mxu0
  %v6413 = vadd.f32 0.0, %v6412
  %v6414 = vpop.f32.mrb[0].mxu0
  %6415 = vmatprep.mubr.f32.mxu0 0.0
  %6416 = vmatmul.mubr.f32.gmra.mrb[0].mxu0 %v6037
  %v6417 = vpop.f32.mrb[0].mxu0
  %v6418 = vadd.f32 0.0, %v6417
  %v6419 = vpop.f32.mrb[0].mxu0
  %6420 = vmatprep.mubr.f32.mxu0 0.0
  %6421 = vmatmul.mubr.f32.gmra.mrb[0].mxu0 %v6040
  %v6422 = vpop.f32.mrb[0].mxu0
  %v6423 = vadd.f32 0.0, %v6422
  %v6424 = vpop.f32.mrb[0].mxu0
  %6425 = vmatprep.mubr.f32.mxu0 0.0
  %6426 = vmatmul.mubr.f32.gmra.mrb[0].mxu0 %v6043
  %v6427 = vpop.f32.mrb[0].mxu0
  %v6428 = vadd.f32 0.0, %v6427
  %v6429 = vpop.f32.mrb[0].mxu0
  %6430 = vmatprep.mubr.f32.mxu0 0.0
  %6431 = vmatmul.mubr.f32.gmra.mrb[0].mxu0 %v6046
  %v6432 = vpop.f32.mrb[0].mxu0
  %v6433 = vadd.f32 0.0, %v6432
  %v6434 = vpop.f32.mrb[0].mxu0
  %6435 = vdwg.mxu0
  %v6436 = vadd.f32 %v5726, %v6118
  %v6437 = vadd.f32 %v5727, %v6123
  %v6438 = vadd.f32 %v5728, %v6128
  %v6439 = vadd.f32 %v5729, %v6133
  %v6440 = vadd.f32 %v5730, %v6138
  %v6441 = vadd.f32 %v5731, %v6143
  %v6442 = vadd.f32 %v5732, %v6148
  %v6443 = vadd.f32 %v5733, %v6153
  %v6444 = vadd.f32 %v5734, %v6158
  %v6445 = vadd.f32 %v5735, %v6163
  %v6446 = vadd.f32 %v5736, %v6168
  %v6447 = vadd.f32 %v5737, %v6173
  %v6448 = vadd.f32 %v5738, %v6178
  %v6449 = vadd.f32 %v5739, %v6183
  %v6450 = vadd.f32 %v5740, %v6188
  %v6451 = vadd.f32 %v5741, %v6193
  %v6452 = vadd.f32 %v5742, %v6198
  %v6453 = vadd.f32 %v5743, %v6203
  %v6454 = vadd.f32 %v5744, %v6208
  %v6455 = vadd.f32 %v5745, %v6213
  %v6456 = vadd.f32 %v5746, %v6218
  %v6457 = vadd.f32 %v5747, %v6223
  %v6458 = vadd.f32 %v5748, %v6228
  %v6459 = vadd.f32 %v5749, %v6233
  %v6460 = vadd.f32 %v5750, %v6238
  %v6461 = vadd.f32 %v5751, %v6243
  %v6462 = vadd.f32 %v5752, %v6248
  %v6463 = vadd.f32 %v5753, %v6253
  %v6464 = vadd.f32 %v5754, %v6258
  %v6465 = vadd.f32 %v5755, %v6263
  %v6466 = vadd.f32 %v5756, %v6268
  %v6467 = vadd.f32 %v5757, %v6273
  %v6468 = vadd.f32 %v5758, %v6278
  %v6469 = vadd.f32 %v5759, %v6283
  %v6470 = vadd.f32 %v5760, %v6288
  %v6471 = vadd.f32 %v5761, %v6293
  %v6472 = vadd.f32 %v5762, %v6298
  %v6473 = vadd.f32 %v5763, %v6303
  %v6474 = vadd.f32 %v5764, %v6308
  %v6475 = vadd.f32 %v5765, %v6313
  %v6476 = vadd.f32 %v5766, %v6318
  %v6477 = vadd.f32 %v5767, %v6323
  %v6478 = vadd.f32 %v5768, %v6328
  %v6479 = vadd.f32 %v5769, %v6333
  %v6480 = vadd.f32 %v5770, %v6338
  %v6481 = vadd.f32 %v5771, %v6343
  %v6482 = vadd.f32 %v5772, %v6348
  %v6483 = vadd.f32 %v5773, %v6353
  %v6484 = vadd.f32 %v5774, %v6358
  %v6485 = vadd.f32 %v5775, %v6363
  %v6486 = vadd.f32 %v5776, %v6368
  %v6487 = vadd.f32 %v5777, %v6373
  %v6488 = vadd.f32 %v5778, %v6378
  %v6489 = vadd.f32 %v5779, %v6383
  %v6490 = vadd.f32 %v5780, %v6388
  %v6491 = vadd.f32 %v5781, %v6393
  %v6492 = vadd.f32 %v5782, %v6398
  %v6493 = vadd.f32 %v5783, %v6403
  %v6494 = vadd.f32 %v5784, %v6408
  %v6495 = vadd.f32 %v5785, %v6413
  %v6496 = vadd.f32 %v5786, %v6418
  %v6497 = vadd.f32 %v5787, %v6423
  %v6498 = vadd.f32 %v5788, %v6428
  %v6499 = vadd.f32 %v5789, %v6433
  %v6500 = vsel %vm90, %v6436, 0.0
  %v6501 = vsel %vm90, %v6437, 0.0
  %v6502 = vadd.f32 %v6500, %v6501
  %v6503 = vsel %vm90, %v6438, 0.0
  %v6504 = vadd.f32 %v6502, %v6503
  %v6505 = vsel %vm90, %v6439, 0.0
  %v6506 = vadd.f32 %v6504, %v6505
  %v6507 = vsel %vm90, %v6440, 0.0
  %v6508 = vadd.f32 %v6506, %v6507
  %v6509 = vsel %vm90, %v6441, 0.0
  %v6510 = vadd.f32 %v6508, %v6509
  %v6511 = vsel %vm90, %v6442, 0.0
  %v6512 = vadd.f32 %v6510, %v6511
  %v6513 = vsel %vm90, %v6443, 0.0
  %v6514 = vadd.f32 %v6512, %v6513
  %v6515 = vsel %vm90, %v6444, 0.0
  %v6516 = vadd.f32 %v6514, %v6515
  %v6517 = vsel %vm90, %v6445, 0.0
  %v6518 = vadd.f32 %v6516, %v6517
  %v6519 = vsel %vm90, %v6446, 0.0
  %v6520 = vadd.f32 %v6518, %v6519
  %v6521 = vsel %vm90, %v6447, 0.0
  %v6522 = vadd.f32 %v6520, %v6521
  %v6523 = vsel %vm90, %v6448, 0.0
  %v6524 = vadd.f32 %v6522, %v6523
  %v6525 = vsel %vm90, %v6449, 0.0
  %v6526 = vadd.f32 %v6524, %v6525
  %v6527 = vsel %vm90, %v6450, 0.0
  %v6528 = vadd.f32 %v6526, %v6527
  %v6529 = vsel %vm90, %v6451, 0.0
  %v6530 = vadd.f32 %v6528, %v6529
  %v6531 = vsel %vm90, %v6452, 0.0
  %v6532 = vadd.f32 %v6530, %v6531
  %v6533 = vsel %vm90, %v6453, 0.0
  %v6534 = vadd.f32 %v6532, %v6533
  %v6535 = vsel %vm90, %v6454, 0.0
  %v6536 = vadd.f32 %v6534, %v6535
  %v6537 = vsel %vm90, %v6455, 0.0
  %v6538 = vadd.f32 %v6536, %v6537
  %v6539 = vsel %vm90, %v6456, 0.0
  %v6540 = vadd.f32 %v6538, %v6539
  %v6541 = vsel %vm90, %v6457, 0.0
  %v6542 = vadd.f32 %v6540, %v6541
  %v6543 = vsel %vm90, %v6458, 0.0
  %v6544 = vadd.f32 %v6542, %v6543
  %v6545 = vsel %vm90, %v6459, 0.0
  %v6546 = vadd.f32 %v6544, %v6545
  %v6547 = vsel %vm90, %v6460, 0.0
  %v6548 = vadd.f32 %v6546, %v6547
  %v6549 = vsel %vm90, %v6461, 0.0
  %v6550 = vadd.f32 %v6548, %v6549
  %v6551 = vsel %vm90, %v6462, 0.0
  %v6552 = vadd.f32 %v6550, %v6551
  %v6553 = vsel %vm90, %v6463, 0.0
  %v6554 = vadd.f32 %v6552, %v6553
  %v6555 = vsel %vm90, %v6464, 0.0
  %v6556 = vadd.f32 %v6554, %v6555
  %v6557 = vsel %vm90, %v6465, 0.0
  %v6558 = vadd.f32 %v6556, %v6557
  %v6559 = vsel %vm90, %v6466, 0.0
  %v6560 = vadd.f32 %v6558, %v6559
  %v6561 = vsel %vm90, %v6467, 0.0
  %v6562 = vadd.f32 %v6560, %v6561
  %v6563 = vsel %vm90, %v6468, 0.0
  %v6564 = vadd.f32 %v6562, %v6563
  %v6565 = vsel %vm90, %v6469, 0.0
  %v6566 = vadd.f32 %v6564, %v6565
  %v6567 = vsel %vm90, %v6470, 0.0
  %v6568 = vadd.f32 %v6566, %v6567
  %v6569 = vsel %vm90, %v6471, 0.0
  %v6570 = vadd.f32 %v6568, %v6569
  %v6571 = vsel %vm90, %v6472, 0.0
  %v6572 = vadd.f32 %v6570, %v6571
  %v6573 = vsel %vm90, %v6473, 0.0
  %v6574 = vadd.f32 %v6572, %v6573
  %v6575 = vsel %vm90, %v6474, 0.0
  %v6576 = vadd.f32 %v6574, %v6575
  %v6577 = vsel %vm90, %v6475, 0.0
  %v6578 = vadd.f32 %v6576, %v6577
  %v6579 = vsel %vm90, %v6476, 0.0
  %v6580 = vadd.f32 %v6578, %v6579
  %v6581 = vsel %vm90, %v6477, 0.0
  %v6582 = vadd.f32 %v6580, %v6581
  %v6583 = vsel %vm90, %v6478, 0.0
  %v6584 = vadd.f32 %v6582, %v6583
  %v6585 = vsel %vm90, %v6479, 0.0
  %v6586 = vadd.f32 %v6584, %v6585
  %v6587 = vsel %vm90, %v6480, 0.0
  %v6588 = vadd.f32 %v6586, %v6587
  %v6589 = vsel %vm90, %v6481, 0.0
  %v6590 = vadd.f32 %v6588, %v6589
  %v6591 = vsel %vm90, %v6482, 0.0
  %v6592 = vadd.f32 %v6590, %v6591
  %v6593 = vsel %vm90, %v6483, 0.0
  %v6594 = vadd.f32 %v6592, %v6593
  %v6595 = vsel %vm90, %v6484, 0.0
  %v6596 = vadd.f32 %v6594, %v6595
  %v6597 = vsel %vm90, %v6485, 0.0
  %v6598 = vadd.f32 %v6596, %v6597
  %v6599 = vsel %vm90, %v6486, 0.0
  %v6600 = vadd.f32 %v6598, %v6599
  %v6601 = vsel %vm90, %v6487, 0.0
  %v6602 = vadd.f32 %v6600, %v6601
  %v6603 = vsel %vm90, %v6488, 0.0
  %v6604 = vadd.f32 %v6602, %v6603
  %v6605 = vsel %vm90, %v6489, 0.0
  %v6606 = vadd.f32 %v6604, %v6605
  %v6607 = vsel %vm90, %v6490, 0.0
  %v6608 = vadd.f32 %v6606, %v6607
  %v6609 = vsel %vm90, %v6491, 0.0
  %v6610 = vadd.f32 %v6608, %v6609
  %v6611 = vsel %vm90, %v6492, 0.0
  %v6612 = vadd.f32 %v6610, %v6611
  %v6613 = vsel %vm90, %v6493, 0.0
  %v6614 = vadd.f32 %v6612, %v6613
  %v6615 = vsel %vm90, %v6494, 0.0
  %v6616 = vadd.f32 %v6614, %v6615
  %v6617 = vsel %vm90, %v6495, 0.0
  %v6618 = vadd.f32 %v6616, %v6617
  %v6619 = vsel %vm90, %v6496, 0.0
  %v6620 = vadd.f32 %v6618, %v6619
  %v6621 = vsel %vm90, %v6497, 0.0
  %v6622 = vadd.f32 %v6620, %v6621
  %v6623 = vsel %vm90, %v6498, 0.0
  %v6624 = vadd.f32 %v6622, %v6623
  %v6625 = vsel %vm90, %v6499, 0.0
  %v6626 = vadd.f32 %v6624, %v6625
  %v6627 = vrot.slane %v6626, 4
  %v6628 = vadd.f32 %v6626, %v6627
  %v6629 = vrot.slane %v6628, 2
  %v6630 = vadd.f32 %v6628, %v6629
  %v6631 = vrot.slane %v6630, 1
  %v6632 = vadd.f32 %v6630, %v6631
  %v6633 = vmul.f32 %v6632, 0.001953125
  %v6634 = vsub.f32 %v6436, %v6633
  %v6635 = vsub.f32 %v6437, %v6633
  %v6636 = vsub.f32 %v6438, %v6633
  %v6637 = vsub.f32 %v6439, %v6633
  %v6638 = vsub.f32 %v6440, %v6633
  %v6639 = vsub.f32 %v6441, %v6633
  %v6640 = vsub.f32 %v6442, %v6633
  %v6641 = vsub.f32 %v6443, %v6633
  %v6642 = vsub.f32 %v6444, %v6633
  %v6643 = vsub.f32 %v6445, %v6633
  %v6644 = vsub.f32 %v6446, %v6633
  %v6645 = vsub.f32 %v6447, %v6633
  %v6646 = vsub.f32 %v6448, %v6633
  %v6647 = vsub.f32 %v6449, %v6633
  %v6648 = vsub.f32 %v6450, %v6633
  %v6649 = vsub.f32 %v6451, %v6633
  %v6650 = vsub.f32 %v6452, %v6633
  %v6651 = vsub.f32 %v6453, %v6633
  %v6652 = vsub.f32 %v6454, %v6633
  %v6653 = vsub.f32 %v6455, %v6633
  %v6654 = vsub.f32 %v6456, %v6633
  %v6655 = vsub.f32 %v6457, %v6633
  %v6656 = vsub.f32 %v6458, %v6633
  %v6657 = vsub.f32 %v6459, %v6633
  %v6658 = vsub.f32 %v6460, %v6633
  %v6659 = vsub.f32 %v6461, %v6633
  %v6660 = vsub.f32 %v6462, %v6633
  %v6661 = vsub.f32 %v6463, %v6633
  %v6662 = vsub.f32 %v6464, %v6633
  %v6663 = vsub.f32 %v6465, %v6633
  %v6664 = vsub.f32 %v6466, %v6633
  %v6665 = vsub.f32 %v6467, %v6633
  %v6666 = vsub.f32 %v6468, %v6633
  %v6667 = vsub.f32 %v6469, %v6633
  %v6668 = vsub.f32 %v6470, %v6633
  %v6669 = vsub.f32 %v6471, %v6633
  %v6670 = vsub.f32 %v6472, %v6633
  %v6671 = vsub.f32 %v6473, %v6633
  %v6672 = vsub.f32 %v6474, %v6633
  %v6673 = vsub.f32 %v6475, %v6633
  %v6674 = vsub.f32 %v6476, %v6633
  %v6675 = vsub.f32 %v6477, %v6633
  %v6676 = vsub.f32 %v6478, %v6633
  %v6677 = vsub.f32 %v6479, %v6633
  %v6678 = vsub.f32 %v6480, %v6633
  %v6679 = vsub.f32 %v6481, %v6633
  %v6680 = vsub.f32 %v6482, %v6633
  %v6681 = vsub.f32 %v6483, %v6633
  %v6682 = vsub.f32 %v6484, %v6633
  %v6683 = vsub.f32 %v6485, %v6633
  %v6684 = vsub.f32 %v6486, %v6633
  %v6685 = vsub.f32 %v6487, %v6633
  %v6686 = vsub.f32 %v6488, %v6633
  %v6687 = vsub.f32 %v6489, %v6633
  %v6688 = vsub.f32 %v6490, %v6633
  %v6689 = vsub.f32 %v6491, %v6633
  %v6690 = vsub.f32 %v6492, %v6633
  %v6691 = vsub.f32 %v6493, %v6633
  %v6692 = vsub.f32 %v6494, %v6633
  %v6693 = vsub.f32 %v6495, %v6633
  %v6694 = vsub.f32 %v6496, %v6633
  %v6695 = vsub.f32 %v6497, %v6633
  %v6696 = vsub.f32 %v6498, %v6633
  %v6697 = vsub.f32 %v6499, %v6633
  %v6698 = vmul.f32 %v6634, %v6634
  %v6699 = vmul.f32 %v6635, %v6635
  %v6700 = vmul.f32 %v6636, %v6636
  %v6701 = vmul.f32 %v6637, %v6637
  %v6702 = vmul.f32 %v6638, %v6638
  %v6703 = vmul.f32 %v6639, %v6639
  %v6704 = vmul.f32 %v6640, %v6640
  %v6705 = vmul.f32 %v6641, %v6641
  %v6706 = vmul.f32 %v6642, %v6642
  %v6707 = vmul.f32 %v6643, %v6643
  %v6708 = vmul.f32 %v6644, %v6644
  %v6709 = vmul.f32 %v6645, %v6645
  %v6710 = vmul.f32 %v6646, %v6646
  %v6711 = vmul.f32 %v6647, %v6647
  %v6712 = vmul.f32 %v6648, %v6648
  %v6713 = vmul.f32 %v6649, %v6649
  %v6714 = vmul.f32 %v6650, %v6650
  %v6715 = vmul.f32 %v6651, %v6651
  %v6716 = vmul.f32 %v6652, %v6652
  %v6717 = vmul.f32 %v6653, %v6653
  %v6718 = vmul.f32 %v6654, %v6654
  %v6719 = vmul.f32 %v6655, %v6655
  %v6720 = vmul.f32 %v6656, %v6656
  %v6721 = vmul.f32 %v6657, %v6657
  %v6722 = vmul.f32 %v6658, %v6658
  %v6723 = vmul.f32 %v6659, %v6659
  %v6724 = vmul.f32 %v6660, %v6660
  %v6725 = vmul.f32 %v6661, %v6661
  %v6726 = vmul.f32 %v6662, %v6662
  %v6727 = vmul.f32 %v6663, %v6663
  %v6728 = vmul.f32 %v6664, %v6664
  %v6729 = vmul.f32 %v6665, %v6665
  %v6730 = vmul.f32 %v6666, %v6666
  %v6731 = vmul.f32 %v6667, %v6667
  %v6732 = vmul.f32 %v6668, %v6668
  %v6733 = vmul.f32 %v6669, %v6669
  %v6734 = vmul.f32 %v6670, %v6670
  %v6735 = vmul.f32 %v6671, %v6671
  %v6736 = vmul.f32 %v6672, %v6672
  %v6737 = vmul.f32 %v6673, %v6673
  %v6738 = vmul.f32 %v6674, %v6674
  %v6739 = vmul.f32 %v6675, %v6675
  %v6740 = vmul.f32 %v6676, %v6676
  %v6741 = vmul.f32 %v6677, %v6677
  %v6742 = vmul.f32 %v6678, %v6678
  %v6743 = vmul.f32 %v6679, %v6679
  %v6744 = vmul.f32 %v6680, %v6680
  %v6745 = vmul.f32 %v6681, %v6681
  %v6746 = vmul.f32 %v6682, %v6682
  %v6747 = vmul.f32 %v6683, %v6683
  %v6748 = vmul.f32 %v6684, %v6684
  %v6749 = vmul.f32 %v6685, %v6685
  %v6750 = vmul.f32 %v6686, %v6686
  %v6751 = vmul.f32 %v6687, %v6687
  %v6752 = vmul.f32 %v6688, %v6688
  %v6753 = vmul.f32 %v6689, %v6689
  %v6754 = vmul.f32 %v6690, %v6690
  %v6755 = vmul.f32 %v6691, %v6691
  %v6756 = vmul.f32 %v6692, %v6692
  %v6757 = vmul.f32 %v6693, %v6693
  %v6758 = vmul.f32 %v6694, %v6694
  %v6759 = vmul.f32 %v6695, %v6695
  %v6760 = vmul.f32 %v6696, %v6696
  %v6761 = vmul.f32 %v6697, %v6697
  %v6762 = vsel %vm90, %v6698, 0.0
  %v6763 = vsel %vm90, %v6699, 0.0
  %v6764 = vadd.f32 %v6762, %v6763
  %v6765 = vsel %vm90, %v6700, 0.0
  %v6766 = vadd.f32 %v6764, %v6765
  %v6767 = vsel %vm90, %v6701, 0.0
  %v6768 = vadd.f32 %v6766, %v6767
  %v6769 = vsel %vm90, %v6702, 0.0
  %v6770 = vadd.f32 %v6768, %v6769
  %v6771 = vsel %vm90, %v6703, 0.0
  %v6772 = vadd.f32 %v6770, %v6771
  %v6773 = vsel %vm90, %v6704, 0.0
  %v6774 = vadd.f32 %v6772, %v6773
  %v6775 = vsel %vm90, %v6705, 0.0
  %v6776 = vadd.f32 %v6774, %v6775
  %v6777 = vsel %vm90, %v6706, 0.0
  %v6778 = vadd.f32 %v6776, %v6777
  %v6779 = vsel %vm90, %v6707, 0.0
  %v6780 = vadd.f32 %v6778, %v6779
  %v6781 = vsel %vm90, %v6708, 0.0
  %v6782 = vadd.f32 %v6780, %v6781
  %v6783 = vsel %vm90, %v6709, 0.0
  %v6784 = vadd.f32 %v6782, %v6783
  %v6785 = vsel %vm90, %v6710, 0.0
  %v6786 = vadd.f32 %v6784, %v6785
  %v6787 = vsel %vm90, %v6711, 0.0
  %v6788 = vadd.f32 %v6786, %v6787
  %v6789 = vsel %vm90, %v6712, 0.0
  %v6790 = vadd.f32 %v6788, %v6789
  %v6791 = vsel %vm90, %v6713, 0.0
  %v6792 = vadd.f32 %v6790, %v6791
  %v6793 = vsel %vm90, %v6714, 0.0
  %v6794 = vadd.f32 %v6792, %v6793
  %v6795 = vsel %vm90, %v6715, 0.0
  %v6796 = vadd.f32 %v6794, %v6795
  %v6797 = vsel %vm90, %v6716, 0.0
  %v6798 = vadd.f32 %v6796, %v6797
  %v6799 = vsel %vm90, %v6717, 0.0
  %v6800 = vadd.f32 %v6798, %v6799
  %v6801 = vsel %vm90, %v6718, 0.0
  %v6802 = vadd.f32 %v6800, %v6801
  %v6803 = vsel %vm90, %v6719, 0.0
  %v6804 = vadd.f32 %v6802, %v6803
  %v6805 = vsel %vm90, %v6720, 0.0
  %v6806 = vadd.f32 %v6804, %v6805
  %v6807 = vsel %vm90, %v6721, 0.0
  %v6808 = vadd.f32 %v6806, %v6807
  %v6809 = vsel %vm90, %v6722, 0.0
  %v6810 = vadd.f32 %v6808, %v6809
  %v6811 = vsel %vm90, %v6723, 0.0
  %v6812 = vadd.f32 %v6810, %v6811
  %v6813 = vsel %vm90, %v6724, 0.0
  %v6814 = vadd.f32 %v6812, %v6813
  %v6815 = vsel %vm90, %v6725, 0.0
  %v6816 = vadd.f32 %v6814, %v6815
  %v6817 = vsel %vm90, %v6726, 0.0
  %v6818 = vadd.f32 %v6816, %v6817
  %v6819 = vsel %vm90, %v6727, 0.0
  %v6820 = vadd.f32 %v6818, %v6819
  %v6821 = vsel %vm90, %v6728, 0.0
  %v6822 = vadd.f32 %v6820, %v6821
  %v6823 = vsel %vm90, %v6729, 0.0
  %v6824 = vadd.f32 %v6822, %v6823
  %v6825 = vsel %vm90, %v6730, 0.0
  %v6826 = vadd.f32 %v6824, %v6825
  %v6827 = vsel %vm90, %v6731, 0.0
  %v6828 = vadd.f32 %v6826, %v6827
  %v6829 = vsel %vm90, %v6732, 0.0
  %v6830 = vadd.f32 %v6828, %v6829
  %v6831 = vsel %vm90, %v6733, 0.0
  %v6832 = vadd.f32 %v6830, %v6831
  %v6833 = vsel %vm90, %v6734, 0.0
  %v6834 = vadd.f32 %v6832, %v6833
  %v6835 = vsel %vm90, %v6735, 0.0
  %v6836 = vadd.f32 %v6834, %v6835
  %v6837 = vsel %vm90, %v6736, 0.0
  %v6838 = vadd.f32 %v6836, %v6837
  %v6839 = vsel %vm90, %v6737, 0.0
  %v6840 = vadd.f32 %v6838, %v6839
  %v6841 = vsel %vm90, %v6738, 0.0
  %v6842 = vadd.f32 %v6840, %v6841
  %v6843 = vsel %vm90, %v6739, 0.0
  %v6844 = vadd.f32 %v6842, %v6843
  %v6845 = vsel %vm90, %v6740, 0.0
  %v6846 = vadd.f32 %v6844, %v6845
  %v6847 = vsel %vm90, %v6741, 0.0
  %v6848 = vadd.f32 %v6846, %v6847
  %v6849 = vsel %vm90, %v6742, 0.0
  %v6850 = vadd.f32 %v6848, %v6849
  %v6851 = vsel %vm90, %v6743, 0.0
  %v6852 = vadd.f32 %v6850, %v6851
  %v6853 = vsel %vm90, %v6744, 0.0
  %v6854 = vadd.f32 %v6852, %v6853
  %v6855 = vsel %vm90, %v6745, 0.0
  %v6856 = vadd.f32 %v6854, %v6855
  %v6857 = vsel %vm90, %v6746, 0.0
  %v6858 = vadd.f32 %v6856, %v6857
  %v6859 = vsel %vm90, %v6747, 0.0
  %v6860 = vadd.f32 %v6858, %v6859
  %v6861 = vsel %vm90, %v6748, 0.0
  %v6862 = vadd.f32 %v6860, %v6861
  %v6863 = vsel %vm90, %v6749, 0.0
  %v6864 = vadd.f32 %v6862, %v6863
  %v6865 = vsel %vm90, %v6750, 0.0
  %v6866 = vadd.f32 %v6864, %v6865
  %v6867 = vsel %vm90, %v6751, 0.0
  %v6868 = vadd.f32 %v6866, %v6867
  %v6869 = vsel %vm90, %v6752, 0.0
  %v6870 = vadd.f32 %v6868, %v6869
  %v6871 = vsel %vm90, %v6753, 0.0
  %v6872 = vadd.f32 %v6870, %v6871
  %v6873 = vsel %vm90, %v6754, 0.0
  %v6874 = vadd.f32 %v6872, %v6873
  %v6875 = vsel %vm90, %v6755, 0.0
  %v6876 = vadd.f32 %v6874, %v6875
  %v6877 = vsel %vm90, %v6756, 0.0
  %v6878 = vadd.f32 %v6876, %v6877
  %v6879 = vsel %vm90, %v6757, 0.0
  %v6880 = vadd.f32 %v6878, %v6879
  %v6881 = vsel %vm90, %v6758, 0.0
  %v6882 = vadd.f32 %v6880, %v6881
  %v6883 = vsel %vm90, %v6759, 0.0
  %v6884 = vadd.f32 %v6882, %v6883
  %v6885 = vsel %vm90, %v6760, 0.0
  %v6886 = vadd.f32 %v6884, %v6885
  %v6887 = vsel %vm90, %v6761, 0.0
  %v6888 = vadd.f32 %v6886, %v6887
  %v6889 = vrot.slane %v6888, 4
  %v6890 = vadd.f32 %v6888, %v6889
  %v6891 = vrot.slane %v6890, 2
  %v6892 = vadd.f32 %v6890, %v6891
  %v6893 = vrot.slane %v6892, 1
  %v6894 = vadd.f32 %v6892, %v6893
  %v6895 = vmul.f32 %v6894, 0.001953125
  %v6896 = vadd.f32 %v6895, 1e-05
  %v6897 = vrsqrt.pop %v6896
  %v6898 = vmul.f32 %v235, %v6897
  %v6900 = vlaneseq
  %v6901 = vshrl.u32 %v6900, 7
  %v6902 = vsub.s32 0, %v6901
  %v6903 = vrot.slane %v6898, %v6902
  %v6905 = vmul.f32 %v6634, %v6903
  %v6906 = vmul.f32 %v6635, %v6903
  %v6907 = vmul.f32 %v6636, %v6903
  %v6908 = vmul.f32 %v6637, %v6903
  %v6909 = vmul.f32 %v6638, %v6903
  %v6910 = vmul.f32 %v6639, %v6903
  %v6911 = vmul.f32 %v6640, %v6903
  %v6912 = vmul.f32 %v6641, %v6903
  %v6913 = vmul.f32 %v6642, %v6903
  %v6914 = vmul.f32 %v6643, %v6903
  %v6915 = vmul.f32 %v6644, %v6903
  %v6916 = vmul.f32 %v6645, %v6903
  %v6917 = vmul.f32 %v6646, %v6903
  %v6918 = vmul.f32 %v6647, %v6903
  %v6919 = vmul.f32 %v6648, %v6903
  %v6920 = vmul.f32 %v6649, %v6903
  %v6921 = vmul.f32 %v6650, %v6903
  %v6922 = vmul.f32 %v6651, %v6903
  %v6923 = vmul.f32 %v6652, %v6903
  %v6924 = vmul.f32 %v6653, %v6903
  %v6925 = vmul.f32 %v6654, %v6903
  %v6926 = vmul.f32 %v6655, %v6903
  %v6927 = vmul.f32 %v6656, %v6903
  %v6928 = vmul.f32 %v6657, %v6903
  %v6929 = vmul.f32 %v6658, %v6903
  %v6930 = vmul.f32 %v6659, %v6903
  %v6931 = vmul.f32 %v6660, %v6903
  %v6932 = vmul.f32 %v6661, %v6903
  %v6933 = vmul.f32 %v6662, %v6903
  %v6934 = vmul.f32 %v6663, %v6903
  %v6935 = vmul.f32 %v6664, %v6903
  %v6936 = vmul.f32 %v6665, %v6903
  %v6937 = vmul.f32 %v6666, %v6903
  %v6938 = vmul.f32 %v6667, %v6903
  %v6939 = vmul.f32 %v6668, %v6903
  %v6940 = vmul.f32 %v6669, %v6903
  %v6941 = vmul.f32 %v6670, %v6903
  %v6942 = vmul.f32 %v6671, %v6903
  %v6943 = vmul.f32 %v6672, %v6903
  %v6944 = vmul.f32 %v6673, %v6903
  %v6945 = vmul.f32 %v6674, %v6903
  %v6946 = vmul.f32 %v6675, %v6903
  %v6947 = vmul.f32 %v6676, %v6903
  %v6948 = vmul.f32 %v6677, %v6903
  %v6949 = vmul.f32 %v6678, %v6903
  %v6950 = vmul.f32 %v6679, %v6903
  %v6951 = vmul.f32 %v6680, %v6903
  %v6952 = vmul.f32 %v6681, %v6903
  %v6953 = vmul.f32 %v6682, %v6903
  %v6954 = vmul.f32 %v6683, %v6903
  %v6955 = vmul.f32 %v6684, %v6903
  %v6956 = vmul.f32 %v6685, %v6903
  %v6957 = vmul.f32 %v6686, %v6903
  %v6958 = vmul.f32 %v6687, %v6903
  %v6959 = vmul.f32 %v6688, %v6903
  %v6960 = vmul.f32 %v6689, %v6903
  %v6961 = vmul.f32 %v6690, %v6903
  %v6962 = vmul.f32 %v6691, %v6903
  %v6963 = vmul.f32 %v6692, %v6903
  %v6964 = vmul.f32 %v6693, %v6903
  %v6965 = vmul.f32 %v6694, %v6903
  %v6966 = vmul.f32 %v6695, %v6903
  %v6967 = vmul.f32 %v6696, %v6903
  %v6968 = vmul.f32 %v6697, %v6903
  %v6970 = vlaneseq
  %v6971 = vshrl.u32 %v6970, 7
  %v6972 = vsub.s32 0, %v6971
  %v6973 = vrot.slane %v236, %v6972
  %v6975 = vadd.f32 %v6905, %v6973
  %v6976 = vadd.f32 %v6906, %v6973
  %v6977 = vadd.f32 %v6907, %v6973
  %v6978 = vadd.f32 %v6908, %v6973
  %v6979 = vadd.f32 %v6909, %v6973
  %v6980 = vadd.f32 %v6910, %v6973
  %v6981 = vadd.f32 %v6911, %v6973
  %v6982 = vadd.f32 %v6912, %v6973
  %v6983 = vadd.f32 %v6913, %v6973
  %v6984 = vadd.f32 %v6914, %v6973
  %v6985 = vadd.f32 %v6915, %v6973
  %v6986 = vadd.f32 %v6916, %v6973
  %v6987 = vadd.f32 %v6917, %v6973
  %v6988 = vadd.f32 %v6918, %v6973
  %v6989 = vadd.f32 %v6919, %v6973
  %v6990 = vadd.f32 %v6920, %v6973
  %v6991 = vadd.f32 %v6921, %v6973
  %v6992 = vadd.f32 %v6922, %v6973
  %v6993 = vadd.f32 %v6923, %v6973
  %v6994 = vadd.f32 %v6924, %v6973
  %v6995 = vadd.f32 %v6925, %v6973
  %v6996 = vadd.f32 %v6926, %v6973
  %v6997 = vadd.f32 %v6927, %v6973
  %v6998 = vadd.f32 %v6928, %v6973
  %v6999 = vadd.f32 %v6929, %v6973
  %v7000 = vadd.f32 %v6930, %v6973
  %v7001 = vadd.f32 %v6931, %v6973
  %v7002 = vadd.f32 %v6932, %v6973
  %v7003 = vadd.f32 %v6933, %v6973
  %v7004 = vadd.f32 %v6934, %v6973
  %v7005 = vadd.f32 %v6935, %v6973
  %v7006 = vadd.f32 %v6936, %v6973
  %v7007 = vadd.f32 %v6937, %v6973
  %v7008 = vadd.f32 %v6938, %v6973
  %v7009 = vadd.f32 %v6939, %v6973
  %v7010 = vadd.f32 %v6940, %v6973
  %v7011 = vadd.f32 %v6941, %v6973
  %v7012 = vadd.f32 %v6942, %v6973
  %v7013 = vadd.f32 %v6943, %v6973
  %v7014 = vadd.f32 %v6944, %v6973
  %v7015 = vadd.f32 %v6945, %v6973
  %v7016 = vadd.f32 %v6946, %v6973
  %v7017 = vadd.f32 %v6947, %v6973
  %v7018 = vadd.f32 %v6948, %v6973
  %v7019 = vadd.f32 %v6949, %v6973
  %v7020 = vadd.f32 %v6950, %v6973
  %v7021 = vadd.f32 %v6951, %v6973
  %v7022 = vadd.f32 %v6952, %v6973
  %v7023 = vadd.f32 %v6953, %v6973
  %v7024 = vadd.f32 %v6954, %v6973
  %v7025 = vadd.f32 %v6955, %v6973
  %v7026 = vadd.f32 %v6956, %v6973
  %v7027 = vadd.f32 %v6957, %v6973
  %v7028 = vadd.f32 %v6958, %v6973
  %v7029 = vadd.f32 %v6959, %v6973
  %v7030 = vadd.f32 %v6960, %v6973
  %v7031 = vadd.f32 %v6961, %v6973
  %v7032 = vadd.f32 %v6962, %v6973
  %v7033 = vadd.f32 %v6963, %v6973
  %v7034 = vadd.f32 %v6964, %v6973
  %v7035 = vadd.f32 %v6965, %v6973
  %v7036 = vadd.f32 %v6966, %v6973
  %v7037 = vadd.f32 %v6967, %v6973
  %v7038 = vadd.f32 %v6968, %v6973
  %v7039 = vmax.f32 %v6975, 0.0
  %v7040 = vmax.f32 %v6976, 0.0
  %v7041 = vmax.f32 %v6977, 0.0
  %v7042 = vmax.f32 %v6978, 0.0
  %v7043 = vmax.f32 %v6979, 0.0
  %v7044 = vmax.f32 %v6980, 0.0
  %v7045 = vmax.f32 %v6981, 0.0
  %v7046 = vmax.f32 %v6982, 0.0
  %v7047 = vmax.f32 %v6983, 0.0
  %v7048 = vmax.f32 %v6984, 0.0
  %v7049 = vmax.f32 %v6985, 0.0
  %v7050 = vmax.f32 %v6986, 0.0
  %v7051 = vmax.f32 %v6987, 0.0
  %v7052 = vmax.f32 %v6988, 0.0
  %v7053 = vmax.f32 %v6989, 0.0
  %v7054 = vmax.f32 %v6990, 0.0
  %v7055 = vmax.f32 %v6991, 0.0
  %v7056 = vmax.f32 %v6992, 0.0
  %v7057 = vmax.f32 %v6993, 0.0
  %v7058 = vmax.f32 %v6994, 0.0
  %v7059 = vmax.f32 %v6995, 0.0
  %v7060 = vmax.f32 %v6996, 0.0
  %v7061 = vmax.f32 %v6997, 0.0
  %v7062 = vmax.f32 %v6998, 0.0
  %v7063 = vmax.f32 %v6999, 0.0
  %v7064 = vmax.f32 %v7000, 0.0
  %v7065 = vmax.f32 %v7001, 0.0
  %v7066 = vmax.f32 %v7002, 0.0
  %v7067 = vmax.f32 %v7003, 0.0
  %v7068 = vmax.f32 %v7004, 0.0
  %v7069 = vmax.f32 %v7005, 0.0
  %v7070 = vmax.f32 %v7006, 0.0
  %v7071 = vmax.f32 %v7007, 0.0
  %v7072 = vmax.f32 %v7008, 0.0
  %v7073 = vmax.f32 %v7009, 0.0
  %v7074 = vmax.f32 %v7010, 0.0
  %v7075 = vmax.f32 %v7011, 0.0
  %v7076 = vmax.f32 %v7012, 0.0
  %v7077 = vmax.f32 %v7013, 0.0
  %v7078 = vmax.f32 %v7014, 0.0
  %v7079 = vmax.f32 %v7015, 0.0
  %v7080 = vmax.f32 %v7016, 0.0
  %v7081 = vmax.f32 %v7017, 0.0
  %v7082 = vmax.f32 %v7018, 0.0
  %v7083 = vmax.f32 %v7019, 0.0
  %v7084 = vmax.f32 %v7020, 0.0
  %v7085 = vmax.f32 %v7021, 0.0
  %v7086 = vmax.f32 %v7022, 0.0
  %v7087 = vmax.f32 %v7023, 0.0
  %v7088 = vmax.f32 %v7024, 0.0
  %v7089 = vmax.f32 %v7025, 0.0
  %v7090 = vmax.f32 %v7026, 0.0
  %v7091 = vmax.f32 %v7027, 0.0
  %v7092 = vmax.f32 %v7028, 0.0
  %v7093 = vmax.f32 %v7029, 0.0
  %v7094 = vmax.f32 %v7030, 0.0
  %v7095 = vmax.f32 %v7031, 0.0
  %v7096 = vmax.f32 %v7032, 0.0
  %v7097 = vmax.f32 %v7033, 0.0
  %v7098 = vmax.f32 %v7034, 0.0
  %v7099 = vmax.f32 %v7035, 0.0
  %v7100 = vmax.f32 %v7036, 0.0
  %v7101 = vmax.f32 %v7037, 0.0
  %v7102 = vmax.f32 %v7038, 0.0
  %7103 = vst.msk [vmem:[%s105 + $0x1] sm:$0xff] %vm90, %v7039
  %7104 = vst.msk [vmem:[%s105 + $0x9] sm:$0xff] %vm90, %v7040
  %7105 = vst.msk [vmem:[%s105 + $0x19] sm:$0xff] %vm90, %v7041
  %7106 = vst.msk [vmem:[%s105 + $0x21] sm:$0xff] %vm90, %v7042
  %7107 = vst.msk [vmem:[%s105 + $0x31] sm:$0xff] %vm90, %v7043
  %7108 = vst.msk [vmem:[%s105 + $0x39] sm:$0xff] %vm90, %v7044
  %7109 = vst.msk [vmem:[%s105 + $0x49] sm:$0xff] %vm90, %v7045
  %7110 = vst.msk [vmem:[%s105 + $0x51] sm:$0xff] %vm90, %v7046
  %7111 = vst.msk [vmem:[%s105 + $0x61] sm:$0xff] %vm90, %v7047
  %7112 = vst.msk [vmem:[%s105 + $0x69] sm:$0xff] %vm90, %v7048
  %7113 = vst.msk [vmem:[%s105 + $0x79] sm:$0xff] %vm90, %v7049
  %7114 = vst.msk [vmem:[%s105 + $0x81] sm:$0xff] %vm90, %v7050
  %7115 = vst.msk [vmem:[%s105 + $0x91] sm:$0xff] %vm90, %v7051
  %7116 = vst.msk [vmem:[%s105 + $0x99] sm:$0xff] %vm90, %v7052
  %7117 = vst.msk [vmem:[%s105 + $0xa9] sm:$0xff] %vm90, %v7053
  %7118 = vst.msk [vmem:[%s105 + $0xb1] sm:$0xff] %vm90, %v7054
  %7119 = vst.msk [vmem:[%s105 + $0xc1] sm:$0xff] %vm90, %v7055
  %7120 = vst.msk [vmem:[%s105 + $0xc9] sm:$0xff] %vm90, %v7056
  %7121 = vst.msk [vmem:[%s105 + $0xd9] sm:$0xff] %vm90, %v7057
  %7122 = vst.msk [vmem:[%s105 + $0xe1] sm:$0xff] %vm90, %v7058
  %7123 = vst.msk [vmem:[%s105 + $0xf1] sm:$0xff] %vm90, %v7059
  %7124 = vst.msk [vmem:[%s105 + $0xf9] sm:$0xff] %vm90, %v7060
  %7125 = vst.msk [vmem:[%s105 + $0x109] sm:$0xff] %vm90, %v7061
  %7126 = vst.msk [vmem:[%s105 + $0x111] sm:$0xff] %vm90, %v7062
  %7127 = vst.msk [vmem:[%s105 + $0x121] sm:$0xff] %vm90, %v7063
  %7128 = vst.msk [vmem:[%s105 + $0x129] sm:$0xff] %vm90, %v7064
  %7129 = vst.msk [vmem:[%s105 + $0x139] sm:$0xff] %vm90, %v7065
  %7130 = vst.msk [vmem:[%s105 + $0x141] sm:$0xff] %vm90, %v7066
  %7131 = vst.msk [vmem:[%s105 + $0x151] sm:$0xff] %vm90, %v7067
  %7132 = vst.msk [vmem:[%s105 + $0x159] sm:$0xff] %vm90, %v7068
  %7133 = vst.msk [vmem:[%s105 + $0x169] sm:$0xff] %vm90, %v7069
  %7134 = vst.msk [vmem:[%s105 + $0x171] sm:$0xff] %vm90, %v7070
  %7135 = vst.msk [vmem:[%s105 + $0x1b1] sm:$0xff] %vm90, %v7071
  %7136 = vst.msk [vmem:[%s105 + $0x1b9] sm:$0xff] %vm90, %v7072
  %7137 = vst.msk [vmem:[%s105 + $0x1c9] sm:$0xff] %vm90, %v7073
  %7138 = vst.msk [vmem:[%s105 + $0x1d1] sm:$0xff] %vm90, %v7074
  %7139 = vst.msk [vmem:[%s105 + $0x1e1] sm:$0xff] %vm90, %v7075
  %7140 = vst.msk [vmem:[%s105 + $0x1e9] sm:$0xff] %vm90, %v7076
  %7141 = vst.msk [vmem:[%s105 + $0x1f9] sm:$0xff] %vm90, %v7077
  %7142 = vst.msk [vmem:[%s105 + $0x201] sm:$0xff] %vm90, %v7078
  %7143 = vst.msk [vmem:[%s105 + $0x211] sm:$0xff] %vm90, %v7079
  %7144 = vst.msk [vmem:[%s105 + $0x219] sm:$0xff] %vm90, %v7080
  %7145 = vst.msk [vmem:[%s105 + $0x229] sm:$0xff] %vm90, %v7081
  %7146 = vst.msk [vmem:[%s105 + $0x231] sm:$0xff] %vm90, %v7082
  %7147 = vst.msk [vmem:[%s105 + $0x241] sm:$0xff] %vm90, %v7083
  %7148 = vst.msk [vmem:[%s105 + $0x249] sm:$0xff] %vm90, %v7084
  %7149 = vst.msk [vmem:[%s105 + $0x259] sm:$0xff] %vm90, %v7085
  %7150 = vst.msk [vmem:[%s105 + $0x261] sm:$0xff] %vm90, %v7086
  %7151 = vst.msk [vmem:[%s105 + $0x271] sm:$0xff] %vm90, %v7087
  %7152 = vst.msk [vmem:[%s105 + $0x279] sm:$0xff] %vm90, %v7088
  %7153 = vst.msk [vmem:[%s105 + $0x289] sm:$0xff] %vm90, %v7089
  %7154 = vst.msk [vmem:[%s105 + $0x291] sm:$0xff] %vm90, %v7090
  %7155 = vst.msk [vmem:[%s105 + $0x2a1] sm:$0xff] %vm90, %v7091
  %7156 = vst.msk [vmem:[%s105 + $0x2a9] sm:$0xff] %vm90, %v7092
  %7157 = vst.msk [vmem:[%s105 + $0x2b9] sm:$0xff] %vm90, %v7093
  %7158 = vst.msk [vmem:[%s105 + $0x2c1] sm:$0xff] %vm90, %v7094
  %7159 = vst.msk [vmem:[%s105 + $0x2d1] sm:$0xff] %vm90, %v7095
  %7160 = vst.msk [vmem:[%s105 + $0x2d9] sm:$0xff] %vm90, %v7096
  %7161 = vst.msk [vmem:[%s105 + $0x2e9] sm:$0xff] %vm90, %v7097
  %7162 = vst.msk [vmem:[%s105 + $0x2f1] sm:$0xff] %vm90, %v7098
  %7163 = vst.msk [vmem:[%s105 + $0x301] sm:$0xff] %vm90, %v7099
  %7164 = vst.msk [vmem:[%s105 + $0x309] sm:$0xff] %vm90, %v7100
  %7165 = vst.msk [vmem:[%s105 + $0x319] sm:$0xff] %vm90, %v7101
  %7166 = vst.msk [vmem:[%s105 + $0x321] sm:$0xff] %vm90, %v7102
  %v7167 = vld [vmem:[%s5] sm:$0x1]
  %v7168 = vld [vmem:[%s6] sm:$0x1]
  %v7169 = vld [vmem:[#allocation2] sm:$0xff]
  %v7170 = vld [vmem:[#allocation2 + $0x8] sm:$0xff]
  %v7171 = vld [vmem:[#allocation2 + $0x18] sm:$0xff]
  %v7172 = vld [vmem:[#allocation2 + $0x20] sm:$0xff]
  %v7173 = vld [vmem:[#allocation2 + $0x30] sm:$0xff]
  %v7174 = vld [vmem:[#allocation2 + $0x38] sm:$0xff]
  %v7175 = vld [vmem:[#allocation2 + $0x48] sm:$0xff]
  %v7176 = vld [vmem:[#allocation2 + $0x50] sm:$0xff]
  %v7177 = vld [vmem:[#allocation2 + $0x60] sm:$0xff]
  %v7178 = vld [vmem:[#allocation2 + $0x68] sm:$0xff]
  %v7179 = vld [vmem:[#allocation2 + $0x78] sm:$0xff]
  %v7180 = vld [vmem:[#allocation2 + $0x80] sm:$0xff]
  %v7181 = vld [vmem:[#allocation2 + $0x90] sm:$0xff]
  %v7182 = vld [vmem:[#allocation2 + $0x98] sm:$0xff]
  %v7183 = vld [vmem:[#allocation2 + $0xa8] sm:$0xff]
  %v7184 = vld [vmem:[#allocation2 + $0xb0] sm:$0xff]
  %v7185 = vld [vmem:[#allocation2 + $0xc0] sm:$0xff]
  %v7186 = vld [vmem:[#allocation2 + $0xc8] sm:$0xff]
  %v7187 = vld [vmem:[#allocation2 + $0xd8] sm:$0xff]
  %v7188 = vld [vmem:[#allocation2 + $0xe0] sm:$0xff]
  %v7189 = vld [vmem:[#allocation2 + $0xf0] sm:$0xff]
  %v7190 = vld [vmem:[#allocation2 + $0xf8] sm:$0xff]
  %v7191 = vld [vmem:[#allocation2 + $0x108] sm:$0xff]
  %v7192 = vld [vmem:[#allocation2 + $0x110] sm:$0xff]
  %v7193 = vld [vmem:[#allocation2 + $0x120] sm:$0xff]
  %v7194 = vld [vmem:[#allocation2 + $0x128] sm:$0xff]
  %v7195 = vld [vmem:[#allocation2 + $0x138] sm:$0xff]
  %v7196 = vld [vmem:[#allocation2 + $0x140] sm:$0xff]
  %v7197 = vld [vmem:[#allocation2 + $0x150] sm:$0xff]
  %v7198 = vld [vmem:[#allocation2 + $0x158] sm:$0xff]
  %v7199 = vld [vmem:[#allocation2 + $0x168] sm:$0xff]
  %v7200 = vld [vmem:[#allocation2 + $0x170] sm:$0xff]
  %v7201 = vld [vmem:[#allocation2 + $0x1b0] sm:$0xff]
  %v7202 = vld [vmem:[#allocation2 + $0x1b8] sm:$0xff]
  %v7203 = vld [vmem:[#allocation2 + $0x1c8] sm:$0xff]
  %v7204 = vld [vmem:[#allocation2 + $0x1d0] sm:$0xff]
  %v7205 = vld [vmem:[#allocation2 + $0x1e0] sm:$0xff]
  %v7206 = vld [vmem:[#allocation2 + $0x1e8] sm:$0xff]
  %v7207 = vld [vmem:[#allocation2 + $0x1f8] sm:$0xff]
  %v7208 = vld [vmem:[#allocation2 + $0x200] sm:$0xff]
  %v7209 = vld [vmem:[#allocation2 + $0x210] sm:$0xff]
  %v7210 = vld [vmem:[#allocation2 + $0x218] sm:$0xff]
  %v7211 = vld [vmem:[#allocation2 + $0x228] sm:$0xff]
  %v7212 = vld [vmem:[#allocation2 + $0x230] sm:$0xff]
  %v7213 = vld [vmem:[#allocation2 + $0x240] sm:$0xff]
  %v7214 = vld [vmem:[#allocation2 + $0x248] sm:$0xff]
  %v7215 = vld [vmem:[#allocation2 + $0x258] sm:$0xff]
  %v7216 = vld [vmem:[#allocation2 + $0x260] sm:$0xff]
  %v7217 = vld [vmem:[#allocation2 + $0x270] sm:$0xff]
  %v7218 = vld [vmem:[#allocation2 + $0x278] sm:$0xff]
  %v7219 = vld [vmem:[#allocation2 + $0x288] sm:$0xff]
  %v7220 = vld [vmem:[#allocation2 + $0x290] sm:$0xff]
  %v7221 = vld [vmem:[#allocation2 + $0x2a0] sm:$0xff]
  %v7222 = vld [vmem:[#allocation2 + $0x2a8] sm:$0xff]
  %v7223 = vld [vmem:[#allocation2 + $0x2b8] sm:$0xff]
  %v7224 = vld [vmem:[#allocation2 + $0x2c0] sm:$0xff]
  %v7225 = vld [vmem:[#allocation2 + $0x2d0] sm:$0xff]
  %v7226 = vld [vmem:[#allocation2 + $0x2d8] sm:$0xff]
  %v7227 = vld [vmem:[#allocation2 + $0x2e8] sm:$0xff]
  %v7228 = vld [vmem:[#allocation2 + $0x2f0] sm:$0xff]
  %v7229 = vld [vmem:[#allocation2 + $0x300] sm:$0xff]
  %v7230 = vld [vmem:[#allocation2 + $0x308] sm:$0xff]
  %v7231 = vld [vmem:[#allocation2 + $0x318] sm:$0xff]
  %v7232 = vld [vmem:[#allocation2 + $0x320] sm:$0xff]
  %v7233 = vld [vmem:[%s2] sm:$0xf]
  %v7234 = vld [vmem:[#allocation2 + $0x1] sm:$0xff]
  %v7235 = vld [vmem:[#allocation2 + $0x9] sm:$0xff]
  %v7236 = vld [vmem:[#allocation2 + $0x19] sm:$0xff]
  %v7237 = vld [vmem:[#allocation2 + $0x21] sm:$0xff]
  %v7238 = vld [vmem:[#allocation2 + $0x31] sm:$0xff]
  %v7239 = vld [vmem:[#allocation2 + $0x39] sm:$0xff]
  %v7240 = vld [vmem:[#allocation2 + $0x49] sm:$0xff]
  %v7241 = vld [vmem:[#allocation2 + $0x51] sm:$0xff]
  %v7242 = vld [vmem:[#allocation2 + $0x61] sm:$0xff]
  %v7243 = vld [vmem:[#allocation2 + $0x69] sm:$0xff]
  %v7244 = vld [vmem:[#allocation2 + $0x79] sm:$0xff]
  %v7245 = vld [vmem:[#allocation2 + $0x81] sm:$0xff]
  %v7246 = vld [vmem:[#allocation2 + $0x91] sm:$0xff]
  %v7247 = vld [vmem:[#allocation2 + $0x99] sm:$0xff]
  %v7248 = vld [vmem:[#allocation2 + $0xa9] sm:$0xff]
  %v7249 = vld [vmem:[#allocation2 + $0xb1] sm:$0xff]
  %v7250 = vld [vmem:[#allocation2 + $0xc1] sm:$0xff]
  %v7251 = vld [vmem:[#allocation2 + $0xc9] sm:$0xff]
  %v7252 = vld [vmem:[#allocation2 + $0xd9] sm:$0xff]
  %v7253 = vld [vmem:[#allocation2 + $0xe1] sm:$0xff]
  %v7254 = vld [vmem:[#allocation2 + $0xf1] sm:$0xff]
  %v7255 = vld [vmem:[#allocation2 + $0xf9] sm:$0xff]
  %v7256 = vld [vmem:[#allocation2 + $0x109] sm:$0xff]
  %v7257 = vld [vmem:[#allocation2 + $0x111] sm:$0xff]
  %v7258 = vld [vmem:[#allocation2 + $0x121] sm:$0xff]
  %v7259 = vld [vmem:[#allocation2 + $0x129] sm:$0xff]
  %v7260 = vld [vmem:[#allocation2 + $0x139] sm:$0xff]
  %v7261 = vld [vmem:[#allocation2 + $0x141] sm:$0xff]
  %v7262 = vld [vmem:[#allocation2 + $0x151] sm:$0xff]
  %v7263 = vld [vmem:[#allocation2 + $0x159] sm:$0xff]
  %v7264 = vld [vmem:[#allocation2 + $0x169] sm:$0xff]
  %v7265 = vld [vmem:[#allocation2 + $0x171] sm:$0xff]
  %v7266 = vld [vmem:[#allocation2 + $0x1b1] sm:$0xff]
  %v7267 = vld [vmem:[#allocation2 + $0x1b9] sm:$0xff]
  %v7268 = vld [vmem:[#allocation2 + $0x1c9] sm:$0xff]
  %v7269 = vld [vmem:[#allocation2 + $0x1d1] sm:$0xff]
  %v7270 = vld [vmem:[#allocation2 + $0x1e1] sm:$0xff]
  %v7271 = vld [vmem:[#allocation2 + $0x1e9] sm:$0xff]
  %v7272 = vld [vmem:[#allocation2 + $0x1f9] sm:$0xff]
  %v7273 = vld [vmem:[#allocation2 + $0x201] sm:$0xff]
  %v7274 = vld [vmem:[#allocation2 + $0x211] sm:$0xff]
  %v7275 = vld [vmem:[#allocation2 + $0x219] sm:$0xff]
  %v7276 = vld [vmem:[#allocation2 + $0x229] sm:$0xff]
  %v7277 = vld [vmem:[#allocation2 + $0x231] sm:$0xff]
  %v7278 = vld [vmem:[#allocation2 + $0x241] sm:$0xff]
  %v7279 = vld [vmem:[#allocation2 + $0x249] sm:$0xff]
  %v7280 = vld [vmem:[#allocation2 + $0x259] sm:$0xff]
  %v7281 = vld [vmem:[#allocation2 + $0x261] sm:$0xff]
  %v7282 = vld [vmem:[#allocation2 + $0x271] sm:$0xff]
  %v7283 = vld [vmem:[#allocation2 + $0x279] sm:$0xff]
  %v7284 = vld [vmem:[#allocation2 + $0x289] sm:$0xff]
  %v7285 = vld [vmem:[#allocation2 + $0x291] sm:$0xff]
  %v7286 = vld [vmem:[#allocation2 + $0x2a1] sm:$0xff]
  %v7287 = vld [vmem:[#allocation2 + $0x2a9] sm:$0xff]
  %v7288 = vld [vmem:[#allocation2 + $0x2b9] sm:$0xff]
  %v7289 = vld [vmem:[#allocation2 + $0x2c1] sm:$0xff]
  %v7290 = vld [vmem:[#allocation2 + $0x2d1] sm:$0xff]
  %v7291 = vld [vmem:[#allocation2 + $0x2d9] sm:$0xff]
  %v7292 = vld [vmem:[#allocation2 + $0x2e9] sm:$0xff]
  %v7293 = vld [vmem:[#allocation2 + $0x2f1] sm:$0xff]
  %v7294 = vld [vmem:[#allocation2 + $0x301] sm:$0xff]
  %v7295 = vld [vmem:[#allocation2 + $0x309] sm:$0xff]
  %v7296 = vld [vmem:[#allocation2 + $0x319] sm:$0xff]
  %v7297 = vld [vmem:[#allocation2 + $0x321] sm:$0xff]
  %s7298 = scalar_lea.vmem %s2, 4
  %v7299 = vld [vmem:[%s7298] sm:$0xf]
  %v7301 = vsel %vm90, %v7234, 0
  %v7304 = vsel %vm90, %v7235, 0
  %v7307 = vsel %vm90, %v7236, 0
  %v7310 = vsel %vm90, %v7237, 0
  %v7313 = vsel %vm90, %v7238, 0
  %v7316 = vsel %vm90, %v7239, 0
  %v7319 = vsel %vm90, %v7240, 0
  %v7322 = vsel %vm90, %v7241, 0
  %v7325 = vsel %vm90, %v7242, 0
  %v7328 = vsel %vm90, %v7243, 0
  %v7331 = vsel %vm90, %v7244, 0
  %v7334 = vsel %vm90, %v7245, 0
  %v7337 = vsel %vm90, %v7246, 0
  %v7340 = vsel %vm90, %v7247, 0
  %v7343 = vsel %vm90, %v7248, 0
  %v7346 = vsel %vm90, %v7249, 0
  %v7349 = vsel %vm90, %v7250, 0
  %v7352 = vsel %vm90, %v7251, 0
  %v7355 = vsel %vm90, %v7252, 0
  %v7358 = vsel %vm90, %v7253, 0
  %v7361 = vsel %vm90, %v7254, 0
  %v7364 = vsel %vm90, %v7255, 0
  %v7367 = vsel %vm90, %v7256, 0
  %v7370 = vsel %vm90, %v7257, 0
  %v7373 = vsel %vm90, %v7258, 0
  %v7376 = vsel %vm90, %v7259, 0
  %v7379 = vsel %vm90, %v7260, 0
  %v7382 = vsel %vm90, %v7261, 0
  %v7385 = vsel %vm90, %v7262, 0
  %v7388 = vsel %vm90, %v7263, 0
  %v7391 = vsel %vm90, %v7264, 0
  %v7394 = vsel %vm90, %v7265, 0
  %v7397 = vsel %vm90, %v7266, 0
  %v7400 = vsel %vm90, %v7267, 0
  %v7403 = vsel %vm90, %v7268, 0
  %v7406 = vsel %vm90, %v7269, 0
  %v7409 = vsel %vm90, %v7270, 0
  %v7412 = vsel %vm90, %v7271, 0
  %v7415 = vsel %vm90, %v7272, 0
  %v7418 = vsel %vm90, %v7273, 0
  %v7421 = vsel %vm90, %v7274, 0
  %v7424 = vsel %vm90, %v7275, 0
  %v7427 = vsel %vm90, %v7276, 0
  %v7430 = vsel %vm90, %v7277, 0
  %v7433 = vsel %vm90, %v7278, 0
  %v7436 = vsel %vm90, %v7279, 0
  %v7439 = vsel %vm90, %v7280, 0
  %v7442 = vsel %vm90, %v7281, 0
  %v7445 = vsel %vm90, %v7282, 0
  %v7448 = vsel %vm90, %v7283, 0
  %v7451 = vsel %vm90, %v7284, 0
  %v7454 = vsel %vm90, %v7285, 0
  %v7457 = vsel %vm90, %v7286, 0
  %v7460 = vsel %vm90, %v7287, 0
  %v7463 = vsel %vm90, %v7288, 0
  %v7466 = vsel %vm90, %v7289, 0
  %v7469 = vsel %vm90, %v7290, 0
  %v7472 = vsel %vm90, %v7291, 0
  %v7475 = vsel %vm90, %v7292, 0
  %v7478 = vsel %vm90, %v7293, 0
  %v7481 = vsel %vm90, %v7294, 0
  %v7484 = vsel %vm90, %v7295, 0
  %v7487 = vsel %vm90, %v7296, 0
  %v7490 = vsel %vm90, %v7297, 0
  %v7493 = vsel %vm560, %v7299, 0
  %7495 = vmatprep.subr.mxu0 0.0
  %7496 = vmatpush1.msra.mxu0 %v7493
  %7497 = vmatprep.subr.mxu0 0.0
  %7498 = vmatpush1.msra.mxu0 0.0
  %7499 = vmatprep.subr.mxu0 0.0
  %7500 = vmatpush1.msra.mxu0 0.0
  %7501 = vmatprep.subr.mxu0 0.0
  %7502 = vmatpush1.msra.mxu0 0.0
  %7503 = vmatprep.subr.mxu0 0.0
  %7504 = vmatpush1.msra.mxu0 0.0
  %7505 = vmatprep.subr.mxu0 0.0
  %7506 = vmatpush1.msra.mxu0 0.0
  %7507 = vmatprep.subr.mxu0 0.0
  %7508 = vmatpush1.msra.mxu0 0.0
  %7509 = vmatprep.subr.mxu0 0.0
  %7510 = vmatpush1.msra.mxu0 0.0
  %7511 = vmatprep.subr.mxu0 0.0
  %7512 = vmatpush1.msra.mxu0 0.0
  %7513 = vmatprep.subr.mxu0 0.0
  %7514 = vmatpush1.msra.mxu0 0.0
  %7515 = vmatprep.subr.mxu0 0.0
  %7516 = vmatpush1.msra.mxu0 0.0
  %7517 = vmatprep.subr.mxu0 0.0
  %7518 = vmatpush1.msra.mxu0 0.0
  %7519 = vmatprep.subr.mxu0 0.0
  %7520 = vmatpush1.msra.mxu0 0.0
  %7521 = vmatprep.subr.mxu0 0.0
  %7522 = vmatpush1.msra.mxu0 0.0
  %7523 = vmatprep.subr.mxu0 0.0
  %7524 = vmatpush1.msra.mxu0 0.0
  %7525 = vmatprep.subr.mxu0 0.0
  %7526 = vmatpush1.msra.mxu0 0.0
  %7527 = vmatprep.subr.mxu0 0.0
  %7528 = vmatpush1.msra.mxu0 0.0
  %7529 = vmatprep.subr.mxu0 0.0
  %7530 = vmatpush1.msra.mxu0 0.0
  %7531 = vmatprep.subr.mxu0 0.0
  %7532 = vmatpush1.msra.mxu0 0.0
  %7533 = vmatprep.subr.mxu0 0.0
  %7534 = vmatpush1.msra.mxu0 0.0
  %7535 = vmatprep.subr.mxu0 0.0
  %7536 = vmatpush1.msra.mxu0 0.0
  %7537 = vmatprep.subr.mxu0 0.0
  %7538 = vmatpush1.msra.mxu0 0.0
  %7539 = vmatprep.subr.mxu0 0.0
  %7540 = vmatpush1.msra.mxu0 0.0
  %7541 = vmatprep.subr.mxu0 0.0
  %7542 = vmatpush1.msra.mxu0 0.0
  %7543 = vmatprep.subr.mxu0 0.0
  %7544 = vmatpush1.msra.mxu0 0.0
  %7545 = vmatprep.subr.mxu0 0.0
  %7546 = vmatpush1.msra.mxu0 0.0
  %7547 = vmatprep.subr.mxu0 0.0
  %7548 = vmatpush1.msra.mxu0 0.0
  %7549 = vmatprep.subr.mxu0 0.0
  %7550 = vmatpush1.msra.mxu0 0.0
  %7551 = vmatprep.subr.mxu0 0.0
  %7552 = vmatpush1.msra.mxu0 0.0
  %7553 = vmatprep.subr.mxu0 0.0
  %7554 = vmatpush1.msra.mxu0 0.0
  %7555 = vmatprep.subr.mxu0 0.0
  %7556 = vmatpush1.msra.mxu0 0.0
  %7557 = vmatprep.subr.mxu0 0.0
  %7558 = vmatpush1.msra.mxu0 0.0
  %7559 = vmatprep.mubr.f32.mxu0 0.0
  %7560 = vmatmul.mubr.f32.gmra.mrb[0].mxu0 %v7301
  %v7561 = vpop.f32.mrb[0].mxu0
  %v7562 = vadd.f32 0.0, %v7561
  %v7563 = vpop.f32.mrb[0].mxu0
  %7564 = vmatprep.mubr.f32.mxu0 0.0
  %7565 = vmatmul.mubr.f32.gmra.mrb[0].mxu0 %v7304
  %v7566 = vpop.f32.mrb[0].mxu0
  %v7567 = vadd.f32 0.0, %v7566
  %v7568 = vpop.f32.mrb[0].mxu0
  %7569 = vmatprep.mubr.f32.mxu0 0.0
  %7570 = vmatmul.mubr.f32.gmra.mrb[0].mxu0 %v7307
  %v7571 = vpop.f32.mrb[0].mxu0
  %v7572 = vadd.f32 0.0, %v7571
  %v7573 = vpop.f32.mrb[0].mxu0
  %7574 = vmatprep.mubr.f32.mxu0 0.0
  %7575 = vmatmul.mubr.f32.gmra.mrb[0].mxu0 %v7310
  %v7576 = vpop.f32.mrb[0].mxu0
  %v7577 = vadd.f32 0.0, %v7576
  %v7578 = vpop.f32.mrb[0].mxu0
  %7579 = vmatprep.mubr.f32.mxu0 0.0
  %7580 = vmatmul.mubr.f32.gmra.mrb[0].mxu0 %v7313
  %v7581 = vpop.f32.mrb[0].mxu0
  %v7582 = vadd.f32 0.0, %v7581
  %v7583 = vpop.f32.mrb[0].mxu0
  %7584 = vmatprep.mubr.f32.mxu0 0.0
  %7585 = vmatmul.mubr.f32.gmra.mrb[0].mxu0 %v7316
  %v7586 = vpop.f32.mrb[0].mxu0
  %v7587 = vadd.f32 0.0, %v7586
  %v7588 = vpop.f32.mrb[0].mxu0
  %7589 = vmatprep.mubr.f32.mxu0 0.0
  %7590 = vmatmul.mubr.f32.gmra.mrb[0].mxu0 %v7319
  %v7591 = vpop.f32.mrb[0].mxu0
  %v7592 = vadd.f32 0.0, %v7591
  %v7593 = vpop.f32.mrb[0].mxu0
  %7594 = vmatprep.mubr.f32.mxu0 0.0
  %7595 = vmatmul.mubr.f32.gmra.mrb[0].mxu0 %v7322
  %v7596 = vpop.f32.mrb[0].mxu0
  %v7597 = vadd.f32 0.0, %v7596
  %v7598 = vpop.f32.mrb[0].mxu0
  %7599 = vmatprep.mubr.f32.mxu0 0.0
  %7600 = vmatmul.mubr.f32.gmra.mrb[0].mxu0 %v7325
  %v7601 = vpop.f32.mrb[0].mxu0
  %v7602 = vadd.f32 0.0, %v7601
  %v7603 = vpop.f32.mrb[0].mxu0
  %7604 = vmatprep.mubr.f32.mxu0 0.0
  %7605 = vmatmul.mubr.f32.gmra.mrb[0].mxu0 %v7328
  %v7606 = vpop.f32.mrb[0].mxu0
  %v7607 = vadd.f32 0.0, %v7606
  %v7608 = vpop.f32.mrb[0].mxu0
  %7609 = vmatprep.mubr.f32.mxu0 0.0
  %7610 = vmatmul.mubr.f32.gmra.mrb[0].mxu0 %v7331
  %v7611 = vpop.f32.mrb[0].mxu0
  %v7612 = vadd.f32 0.0, %v7611
  %v7613 = vpop.f32.mrb[0].mxu0
  %7614 = vmatprep.mubr.f32.mxu0 0.0
  %7615 = vmatmul.mubr.f32.gmra.mrb[0].mxu0 %v7334
  %v7616 = vpop.f32.mrb[0].mxu0
  %v7617 = vadd.f32 0.0, %v7616
  %v7618 = vpop.f32.mrb[0].mxu0
  %7619 = vmatprep.mubr.f32.mxu0 0.0
  %7620 = vmatmul.mubr.f32.gmra.mrb[0].mxu0 %v7337
  %v7621 = vpop.f32.mrb[0].mxu0
  %v7622 = vadd.f32 0.0, %v7621
  %v7623 = vpop.f32.mrb[0].mxu0
  %7624 = vmatprep.mubr.f32.mxu0 0.0
  %7625 = vmatmul.mubr.f32.gmra.mrb[0].mxu0 %v7340
  %v7626 = vpop.f32.mrb[0].mxu0
  %v7627 = vadd.f32 0.0, %v7626
  %v7628 = vpop.f32.mrb[0].mxu0
  %7629 = vmatprep.mubr.f32.mxu0 0.0
  %7630 = vmatmul.mubr.f32.gmra.mrb[0].mxu0 %v7343
  %v7631 = vpop.f32.mrb[0].mxu0
  %v7632 = vadd.f32 0.0, %v7631
  %v7633 = vpop.f32.mrb[0].mxu0
  %7634 = vmatprep.mubr.f32.mxu0 0.0
  %7635 = vmatmul.mubr.f32.gmra.mrb[0].mxu0 %v7346
  %v7636 = vpop.f32.mrb[0].mxu0
  %v7637 = vadd.f32 0.0, %v7636
  %v7638 = vpop.f32.mrb[0].mxu0
  %7639 = vmatprep.mubr.f32.mxu0 0.0
  %7640 = vmatmul.mubr.f32.gmra.mrb[0].mxu0 %v7349
  %v7641 = vpop.f32.mrb[0].mxu0
  %v7642 = vadd.f32 0.0, %v7641
  %v7643 = vpop.f32.mrb[0].mxu0
  %7644 = vmatprep.mubr.f32.mxu0 0.0
  %7645 = vmatmul.mubr.f32.gmra.mrb[0].mxu0 %v7352
  %v7646 = vpop.f32.mrb[0].mxu0
  %v7647 = vadd.f32 0.0, %v7646
  %v7648 = vpop.f32.mrb[0].mxu0
  %7649 = vmatprep.mubr.f32.mxu0 0.0
  %7650 = vmatmul.mubr.f32.gmra.mrb[0].mxu0 %v7355
  %v7651 = vpop.f32.mrb[0].mxu0
  %v7652 = vadd.f32 0.0, %v7651
  %v7653 = vpop.f32.mrb[0].mxu0
  %7654 = vmatprep.mubr.f32.mxu0 0.0
  %7655 = vmatmul.mubr.f32.gmra.mrb[0].mxu0 %v7358
  %v7656 = vpop.f32.mrb[0].mxu0
  %v7657 = vadd.f32 0.0, %v7656
  %v7658 = vpop.f32.mrb[0].mxu0
  %7659 = vmatprep.mubr.f32.mxu0 0.0
  %7660 = vmatmul.mubr.f32.gmra.mrb[0].mxu0 %v7361
  %v7661 = vpop.f32.mrb[0].mxu0
  %v7662 = vadd.f32 0.0, %v7661
  %v7663 = vpop.f32.mrb[0].mxu0
  %7664 = vmatprep.mubr.f32.mxu0 0.0
  %7665 = vmatmul.mubr.f32.gmra.mrb[0].mxu0 %v7364
  %v7666 = vpop.f32.mrb[0].mxu0
  %v7667 = vadd.f32 0.0, %v7666
  %v7668 = vpop.f32.mrb[0].mxu0
  %7669 = vmatprep.mubr.f32.mxu0 0.0
  %7670 = vmatmul.mubr.f32.gmra.mrb[0].mxu0 %v7367
  %v7671 = vpop.f32.mrb[0].mxu0
  %v7672 = vadd.f32 0.0, %v7671
  %v7673 = vpop.f32.mrb[0].mxu0
  %7674 = vmatprep.mubr.f32.mxu0 0.0
  %7675 = vmatmul.mubr.f32.gmra.mrb[0].mxu0 %v7370
  %v7676 = vpop.f32.mrb[0].mxu0
  %v7677 = vadd.f32 0.0, %v7676
  %v7678 = vpop.f32.mrb[0].mxu0
  %7679 = vmatprep.mubr.f32.mxu0 0.0
  %7680 = vmatmul.mubr.f32.gmra.mrb[0].mxu0 %v7373
  %v7681 = vpop.f32.mrb[0].mxu0
  %v7682 = vadd.f32 0.0, %v7681
  %v7683 = vpop.f32.mrb[0].mxu0
  %7684 = vmatprep.mubr.f32.mxu0 0.0
  %7685 = vmatmul.mubr.f32.gmra.mrb[0].mxu0 %v7376
  %v7686 = vpop.f32.mrb[0].mxu0
  %v7687 = vadd.f32 0.0, %v7686
  %v7688 = vpop.f32.mrb[0].mxu0
  %7689 = vmatprep.mubr.f32.mxu0 0.0
  %7690 = vmatmul.mubr.f32.gmra.mrb[0].mxu0 %v7379
  %v7691 = vpop.f32.mrb[0].mxu0
  %v7692 = vadd.f32 0.0, %v7691
  %v7693 = vpop.f32.mrb[0].mxu0
  %7694 = vmatprep.mubr.f32.mxu0 0.0
  %7695 = vmatmul.mubr.f32.gmra.mrb[0].mxu0 %v7382
  %v7696 = vpop.f32.mrb[0].mxu0
  %v7697 = vadd.f32 0.0, %v7696
  %v7698 = vpop.f32.mrb[0].mxu0
  %7699 = vmatprep.mubr.f32.mxu0 0.0
  %7700 = vmatmul.mubr.f32.gmra.mrb[0].mxu0 %v7385
  %v7701 = vpop.f32.mrb[0].mxu0
  %v7702 = vadd.f32 0.0, %v7701
  %v7703 = vpop.f32.mrb[0].mxu0
  %7704 = vmatprep.mubr.f32.mxu0 0.0
  %7705 = vmatmul.mubr.f32.gmra.mrb[0].mxu0 %v7388
  %v7706 = vpop.f32.mrb[0].mxu0
  %v7707 = vadd.f32 0.0, %v7706
  %v7708 = vpop.f32.mrb[0].mxu0
  %7709 = vmatprep.mubr.f32.mxu0 0.0
  %7710 = vmatmul.mubr.f32.gmra.mrb[0].mxu0 %v7391
  %v7711 = vpop.f32.mrb[0].mxu0
  %v7712 = vadd.f32 0.0, %v7711
  %v7713 = vpop.f32.mrb[0].mxu0
  %7714 = vmatprep.mubr.f32.mxu0 0.0
  %7715 = vmatmul.mubr.f32.gmra.mrb[0].mxu0 %v7394
  %v7716 = vpop.f32.mrb[0].mxu0
  %v7717 = vadd.f32 0.0, %v7716
  %v7718 = vpop.f32.mrb[0].mxu0
  %7719 = vmatprep.mubr.f32.mxu0 0.0
  %7720 = vmatmul.mubr.f32.gmra.mrb[0].mxu0 %v7397
  %v7721 = vpop.f32.mrb[0].mxu0
  %v7722 = vadd.f32 0.0, %v7721
  %v7723 = vpop.f32.mrb[0].mxu0
  %7724 = vmatprep.mubr.f32.mxu0 0.0
  %7725 = vmatmul.mubr.f32.gmra.mrb[0].mxu0 %v7400
  %v7726 = vpop.f32.mrb[0].mxu0
  %v7727 = vadd.f32 0.0, %v7726
  %v7728 = vpop.f32.mrb[0].mxu0
  %7729 = vmatprep.mubr.f32.mxu0 0.0
  %7730 = vmatmul.mubr.f32.gmra.mrb[0].mxu0 %v7403
  %v7731 = vpop.f32.mrb[0].mxu0
  %v7732 = vadd.f32 0.0, %v7731
  %v7733 = vpop.f32.mrb[0].mxu0
  %7734 = vmatprep.mubr.f32.mxu0 0.0
  %7735 = vmatmul.mubr.f32.gmra.mrb[0].mxu0 %v7406
  %v7736 = vpop.f32.mrb[0].mxu0
  %v7737 = vadd.f32 0.0, %v7736
  %v7738 = vpop.f32.mrb[0].mxu0
  %7739 = vmatprep.mubr.f32.mxu0 0.0
  %7740 = vmatmul.mubr.f32.gmra.mrb[0].mxu0 %v7409
  %v7741 = vpop.f32.mrb[0].mxu0
  %v7742 = vadd.f32 0.0, %v7741
  %v7743 = vpop.f32.mrb[0].mxu0
  %7744 = vmatprep.mubr.f32.mxu0 0.0
  %7745 = vmatmul.mubr.f32.gmra.mrb[0].mxu0 %v7412
  %v7746 = vpop.f32.mrb[0].mxu0
  %v7747 = vadd.f32 0.0, %v7746
  %v7748 = vpop.f32.mrb[0].mxu0
  %7749 = vmatprep.mubr.f32.mxu0 0.0
  %7750 = vmatmul.mubr.f32.gmra.mrb[0].mxu0 %v7415
  %v7751 = vpop.f32.mrb[0].mxu0
  %v7752 = vadd.f32 0.0, %v7751
  %v7753 = vpop.f32.mrb[0].mxu0
  %7754 = vmatprep.mubr.f32.mxu0 0.0
  %7755 = vmatmul.mubr.f32.gmra.mrb[0].mxu0 %v7418
  %v7756 = vpop.f32.mrb[0].mxu0
  %v7757 = vadd.f32 0.0, %v7756
  %v7758 = vpop.f32.mrb[0].mxu0
  %7759 = vmatprep.mubr.f32.mxu0 0.0
  %7760 = vmatmul.mubr.f32.gmra.mrb[0].mxu0 %v7421
  %v7761 = vpop.f32.mrb[0].mxu0
  %v7762 = vadd.f32 0.0, %v7761
  %v7763 = vpop.f32.mrb[0].mxu0
  %7764 = vmatprep.mubr.f32.mxu0 0.0
  %7765 = vmatmul.mubr.f32.gmra.mrb[0].mxu0 %v7424
  %v7766 = vpop.f32.mrb[0].mxu0
  %v7767 = vadd.f32 0.0, %v7766
  %v7768 = vpop.f32.mrb[0].mxu0
  %7769 = vmatprep.mubr.f32.mxu0 0.0
  %7770 = vmatmul.mubr.f32.gmra.mrb[0].mxu0 %v7427
  %v7771 = vpop.f32.mrb[0].mxu0
  %v7772 = vadd.f32 0.0, %v7771
  %v7773 = vpop.f32.mrb[0].mxu0
  %7774 = vmatprep.mubr.f32.mxu0 0.0
  %7775 = vmatmul.mubr.f32.gmra.mrb[0].mxu0 %v7430
  %v7776 = vpop.f32.mrb[0].mxu0
  %v7777 = vadd.f32 0.0, %v7776
  %v7778 = vpop.f32.mrb[0].mxu0
  %7779 = vmatprep.mubr.f32.mxu0 0.0
  %7780 = vmatmul.mubr.f32.gmra.mrb[0].mxu0 %v7433
  %v7781 = vpop.f32.mrb[0].mxu0
  %v7782 = vadd.f32 0.0, %v7781
  %v7783 = vpop.f32.mrb[0].mxu0
  %7784 = vmatprep.mubr.f32.mxu0 0.0
  %7785 = vmatmul.mubr.f32.gmra.mrb[0].mxu0 %v7436
  %v7786 = vpop.f32.mrb[0].mxu0
  %v7787 = vadd.f32 0.0, %v7786
  %v7788 = vpop.f32.mrb[0].mxu0
  %7789 = vmatprep.mubr.f32.mxu0 0.0
  %7790 = vmatmul.mubr.f32.gmra.mrb[0].mxu0 %v7439
  %v7791 = vpop.f32.mrb[0].mxu0
  %v7792 = vadd.f32 0.0, %v7791
  %v7793 = vpop.f32.mrb[0].mxu0
  %7794 = vmatprep.mubr.f32.mxu0 0.0
  %7795 = vmatmul.mubr.f32.gmra.mrb[0].mxu0 %v7442
  %v7796 = vpop.f32.mrb[0].mxu0
  %v7797 = vadd.f32 0.0, %v7796
  %v7798 = vpop.f32.mrb[0].mxu0
  %7799 = vmatprep.mubr.f32.mxu0 0.0
  %7800 = vmatmul.mubr.f32.gmra.mrb[0].mxu0 %v7445
  %v7801 = vpop.f32.mrb[0].mxu0
  %v7802 = vadd.f32 0.0, %v7801
  %v7803 = vpop.f32.mrb[0].mxu0
  %7804 = vmatprep.mubr.f32.mxu0 0.0
  %7805 = vmatmul.mubr.f32.gmra.mrb[0].mxu0 %v7448
  %v7806 = vpop.f32.mrb[0].mxu0
  %v7807 = vadd.f32 0.0, %v7806
  %v7808 = vpop.f32.mrb[0].mxu0
  %7809 = vmatprep.mubr.f32.mxu0 0.0
  %7810 = vmatmul.mubr.f32.gmra.mrb[0].mxu0 %v7451
  %v7811 = vpop.f32.mrb[0].mxu0
  %v7812 = vadd.f32 0.0, %v7811
  %v7813 = vpop.f32.mrb[0].mxu0
  %7814 = vmatprep.mubr.f32.mxu0 0.0
  %7815 = vmatmul.mubr.f32.gmra.mrb[0].mxu0 %v7454
  %v7816 = vpop.f32.mrb[0].mxu0
  %v7817 = vadd.f32 0.0, %v7816
  %v7818 = vpop.f32.mrb[0].mxu0
  %7819 = vmatprep.mubr.f32.mxu0 0.0
  %7820 = vmatmul.mubr.f32.gmra.mrb[0].mxu0 %v7457
  %v7821 = vpop.f32.mrb[0].mxu0
  %v7822 = vadd.f32 0.0, %v7821
  %v7823 = vpop.f32.mrb[0].mxu0
  %7824 = vmatprep.mubr.f32.mxu0 0.0
  %7825 = vmatmul.mubr.f32.gmra.mrb[0].mxu0 %v7460
  %v7826 = vpop.f32.mrb[0].mxu0
  %v7827 = vadd.f32 0.0, %v7826
  %v7828 = vpop.f32.mrb[0].mxu0
  %7829 = vmatprep.mubr.f32.mxu0 0.0
  %7830 = vmatmul.mubr.f32.gmra.mrb[0].mxu0 %v7463
  %v7831 = vpop.f32.mrb[0].mxu0
  %v7832 = vadd.f32 0.0, %v7831
  %v7833 = vpop.f32.mrb[0].mxu0
  %7834 = vmatprep.mubr.f32.mxu0 0.0
  %7835 = vmatmul.mubr.f32.gmra.mrb[0].mxu0 %v7466
  %v7836 = vpop.f32.mrb[0].mxu0
  %v7837 = vadd.f32 0.0, %v7836
  %v7838 = vpop.f32.mrb[0].mxu0
  %7839 = vmatprep.mubr.f32.mxu0 0.0
  %7840 = vmatmul.mubr.f32.gmra.mrb[0].mxu0 %v7469
  %v7841 = vpop.f32.mrb[0].mxu0
  %v7842 = vadd.f32 0.0, %v7841
  %v7843 = vpop.f32.mrb[0].mxu0
  %7844 = vmatprep.mubr.f32.mxu0 0.0
  %7845 = vmatmul.mubr.f32.gmra.mrb[0].mxu0 %v7472
  %v7846 = vpop.f32.mrb[0].mxu0
  %v7847 = vadd.f32 0.0, %v7846
  %v7848 = vpop.f32.mrb[0].mxu0
  %7849 = vmatprep.mubr.f32.mxu0 0.0
  %7850 = vmatmul.mubr.f32.gmra.mrb[0].mxu0 %v7475
  %v7851 = vpop.f32.mrb[0].mxu0
  %v7852 = vadd.f32 0.0, %v7851
  %v7853 = vpop.f32.mrb[0].mxu0
  %7854 = vmatprep.mubr.f32.mxu0 0.0
  %7855 = vmatmul.mubr.f32.gmra.mrb[0].mxu0 %v7478
  %v7856 = vpop.f32.mrb[0].mxu0
  %v7857 = vadd.f32 0.0, %v7856
  %v7858 = vpop.f32.mrb[0].mxu0
  %7859 = vmatprep.mubr.f32.mxu0 0.0
  %7860 = vmatmul.mubr.f32.gmra.mrb[0].mxu0 %v7481
  %v7861 = vpop.f32.mrb[0].mxu0
  %v7862 = vadd.f32 0.0, %v7861
  %v7863 = vpop.f32.mrb[0].mxu0
  %7864 = vmatprep.mubr.f32.mxu0 0.0
  %7865 = vmatmul.mubr.f32.gmra.mrb[0].mxu0 %v7484
  %v7866 = vpop.f32.mrb[0].mxu0
  %v7867 = vadd.f32 0.0, %v7866
  %v7868 = vpop.f32.mrb[0].mxu0
  %7869 = vmatprep.mubr.f32.mxu0 0.0
  %7870 = vmatmul.mubr.f32.gmra.mrb[0].mxu0 %v7487
  %v7871 = vpop.f32.mrb[0].mxu0
  %v7872 = vadd.f32 0.0, %v7871
  %v7873 = vpop.f32.mrb[0].mxu0
  %7874 = vmatprep.mubr.f32.mxu0 0.0
  %7875 = vmatmul.mubr.f32.gmra.mrb[0].mxu0 %v7490
  %v7876 = vpop.f32.mrb[0].mxu0
  %v7877 = vadd.f32 0.0, %v7876
  %v7878 = vpop.f32.mrb[0].mxu0
  %7879 = vdwg.mxu0
  %v7881 = vsel %vm90, %v7169, 0
  %v7884 = vsel %vm90, %v7170, 0
  %v7887 = vsel %vm90, %v7171, 0
  %v7890 = vsel %vm90, %v7172, 0
  %v7893 = vsel %vm90, %v7173, 0
  %v7896 = vsel %vm90, %v7174, 0
  %v7899 = vsel %vm90, %v7175, 0
  %v7902 = vsel %vm90, %v7176, 0
  %v7905 = vsel %vm90, %v7177, 0
  %v7908 = vsel %vm90, %v7178, 0
  %v7911 = vsel %vm90, %v7179, 0
  %v7914 = vsel %vm90, %v7180, 0
  %v7917 = vsel %vm90, %v7181, 0
  %v7920 = vsel %vm90, %v7182, 0
  %v7923 = vsel %vm90, %v7183, 0
  %v7926 = vsel %vm90, %v7184, 0
  %v7929 = vsel %vm90, %v7185, 0
  %v7932 = vsel %vm90, %v7186, 0
  %v7935 = vsel %vm90, %v7187, 0
  %v7938 = vsel %vm90, %v7188, 0
  %v7941 = vsel %vm90, %v7189, 0
  %v7944 = vsel %vm90, %v7190, 0
  %v7947 = vsel %vm90, %v7191, 0
  %v7950 = vsel %vm90, %v7192, 0
  %v7953 = vsel %vm90, %v7193, 0
  %v7956 = vsel %vm90, %v7194, 0
  %v7959 = vsel %vm90, %v7195, 0
  %v7962 = vsel %vm90, %v7196, 0
  %v7965 = vsel %vm90, %v7197, 0
  %v7968 = vsel %vm90, %v7198, 0
  %v7971 = vsel %vm90, %v7199, 0
  %v7974 = vsel %vm90, %v7200, 0
  %v7977 = vsel %vm90, %v7201, 0
  %v7980 = vsel %vm90, %v7202, 0
  %v7983 = vsel %vm90, %v7203, 0
  %v7986 = vsel %vm90, %v7204, 0
  %v7989 = vsel %vm90, %v7205, 0
  %v7992 = vsel %vm90, %v7206, 0
  %v7995 = vsel %vm90, %v7207, 0
  %v7998 = vsel %vm90, %v7208, 0
  %v8001 = vsel %vm90, %v7209, 0
  %v8004 = vsel %vm90, %v7210, 0
  %v8007 = vsel %vm90, %v7211, 0
  %v8010 = vsel %vm90, %v7212, 0
  %v8013 = vsel %vm90, %v7213, 0
  %v8016 = vsel %vm90, %v7214, 0
  %v8019 = vsel %vm90, %v7215, 0
  %v8022 = vsel %vm90, %v7216, 0
  %v8025 = vsel %vm90, %v7217, 0
  %v8028 = vsel %vm90, %v7218, 0
  %v8031 = vsel %vm90, %v7219, 0
  %v8034 = vsel %vm90, %v7220, 0
  %v8037 = vsel %vm90, %v7221, 0
  %v8040 = vsel %vm90, %v7222, 0
  %v8043 = vsel %vm90, %v7223, 0
  %v8046 = vsel %vm90, %v7224, 0
  %v8049 = vsel %vm90, %v7225, 0
  %v8052 = vsel %vm90, %v7226, 0
  %v8055 = vsel %vm90, %v7227, 0
  %v8058 = vsel %vm90, %v7228, 0
  %v8061 = vsel %vm90, %v7229, 0
  %v8064 = vsel %vm90, %v7230, 0
  %v8067 = vsel %vm90, %v7231, 0
  %v8070 = vsel %vm90, %v7232, 0
  %v8073 = vsel %vm560, %v7233, 0
  %8075 = vmatprep.subr.mxu0 0.0
  %8076 = vmatpush1.msra.mxu0 %v8073
  %8077 = vmatprep.subr.mxu0 0.0
  %8078 = vmatpush1.msra.mxu0 0.0
  %8079 = vmatprep.subr.mxu0 0.0
  %8080 = vmatpush1.msra.mxu0 0.0
  %8081 = vmatprep.subr.mxu0 0.0
  %8082 = vmatpush1.msra.mxu0 0.0
  %8083 = vmatprep.subr.mxu0 0.0
  %8084 = vmatpush1.msra.mxu0 0.0
  %8085 = vmatprep.subr.mxu0 0.0
  %8086 = vmatpush1.msra.mxu0 0.0
  %8087 = vmatprep.subr.mxu0 0.0
  %8088 = vmatpush1.msra.mxu0 0.0
  %8089 = vmatprep.subr.mxu0 0.0
  %8090 = vmatpush1.msra.mxu0 0.0
  %8091 = vmatprep.subr.mxu0 0.0
  %8092 = vmatpush1.msra.mxu0 0.0
  %8093 = vmatprep.subr.mxu0 0.0
  %8094 = vmatpush1.msra.mxu0 0.0
  %8095 = vmatprep.subr.mxu0 0.0
  %8096 = vmatpush1.msra.mxu0 0.0
  %8097 = vmatprep.subr.mxu0 0.0
  %8098 = vmatpush1.msra.mxu0 0.0
  %8099 = vmatprep.subr.mxu0 0.0
  %8100 = vmatpush1.msra.mxu0 0.0
  %8101 = vmatprep.subr.mxu0 0.0
  %8102 = vmatpush1.msra.mxu0 0.0
  %8103 = vmatprep.subr.mxu0 0.0
  %8104 = vmatpush1.msra.mxu0 0.0
  %8105 = vmatprep.subr.mxu0 0.0
  %8106 = vmatpush1.msra.mxu0 0.0
  %8107 = vmatprep.subr.mxu0 0.0
  %8108 = vmatpush1.msra.mxu0 0.0
  %8109 = vmatprep.subr.mxu0 0.0
  %8110 = vmatpush1.msra.mxu0 0.0
  %8111 = vmatprep.subr.mxu0 0.0
  %8112 = vmatpush1.msra.mxu0 0.0
  %8113 = vmatprep.subr.mxu0 0.0
  %8114 = vmatpush1.msra.mxu0 0.0
  %8115 = vmatprep.subr.mxu0 0.0
  %8116 = vmatpush1.msra.mxu0 0.0
  %8117 = vmatprep.subr.mxu0 0.0
  %8118 = vmatpush1.msra.mxu0 0.0
  %8119 = vmatprep.subr.mxu0 0.0
  %8120 = vmatpush1.msra.mxu0 0.0
  %8121 = vmatprep.subr.mxu0 0.0
  %8122 = vmatpush1.msra.mxu0 0.0
  %8123 = vmatprep.subr.mxu0 0.0
  %8124 = vmatpush1.msra.mxu0 0.0
  %8125 = vmatprep.subr.mxu0 0.0
  %8126 = vmatpush1.msra.mxu0 0.0
  %8127 = vmatprep.subr.mxu0 0.0
  %8128 = vmatpush1.msra.mxu0 0.0
  %8129 = vmatprep.subr.mxu0 0.0
  %8130 = vmatpush1.msra.mxu0 0.0
  %8131 = vmatprep.subr.mxu0 0.0
  %8132 = vmatpush1.msra.mxu0 0.0
  %8133 = vmatprep.subr.mxu0 0.0
  %8134 = vmatpush1.msra.mxu0 0.0
  %8135 = vmatprep.subr.mxu0 0.0
  %8136 = vmatpush1.msra.mxu0 0.0
  %8137 = vmatprep.subr.mxu0 0.0
  %8138 = vmatpush1.msra.mxu0 0.0
  %8139 = vmatprep.mubr.f32.mxu0 0.0
  %8140 = vmatmul.mubr.f32.gmra.mrb[0].mxu0 %v7881
  %v8141 = vpop.f32.mrb[0].mxu0
  %v8142 = vadd.f32 %v7562, %v8141
  %v8143 = vpop.f32.mrb[0].mxu0
  %8144 = vmatprep.mubr.f32.mxu0 0.0
  %8145 = vmatmul.mubr.f32.gmra.mrb[0].mxu0 %v7884
  %v8146 = vpop.f32.mrb[0].mxu0
  %v8147 = vadd.f32 %v7567, %v8146
  %v8148 = vpop.f32.mrb[0].mxu0
  %8149 = vmatprep.mubr.f32.mxu0 0.0
  %8150 = vmatmul.mubr.f32.gmra.mrb[0].mxu0 %v7887
  %v8151 = vpop.f32.mrb[0].mxu0
  %v8152 = vadd.f32 %v7572, %v8151
  %v8153 = vpop.f32.mrb[0].mxu0
  %8154 = vmatprep.mubr.f32.mxu0 0.0
  %8155 = vmatmul.mubr.f32.gmra.mrb[0].mxu0 %v7890
  %v8156 = vpop.f32.mrb[0].mxu0
  %v8157 = vadd.f32 %v7577, %v8156
  %v8158 = vpop.f32.mrb[0].mxu0
  %8159 = vmatprep.mubr.f32.mxu0 0.0
  %8160 = vmatmul.mubr.f32.gmra.mrb[0].mxu0 %v7893
  %v8161 = vpop.f32.mrb[0].mxu0
  %v8162 = vadd.f32 %v7582, %v8161
  %v8163 = vpop.f32.mrb[0].mxu0
  %8164 = vmatprep.mubr.f32.mxu0 0.0
  %8165 = vmatmul.mubr.f32.gmra.mrb[0].mxu0 %v7896
  %v8166 = vpop.f32.mrb[0].mxu0
  %v8167 = vadd.f32 %v7587, %v8166
  %v8168 = vpop.f32.mrb[0].mxu0
  %8169 = vmatprep.mubr.f32.mxu0 0.0
  %8170 = vmatmul.mubr.f32.gmra.mrb[0].mxu0 %v7899
  %v8171 = vpop.f32.mrb[0].mxu0
  %v8172 = vadd.f32 %v7592, %v8171
  %v8173 = vpop.f32.mrb[0].mxu0
  %8174 = vmatprep.mubr.f32.mxu0 0.0
  %8175 = vmatmul.mubr.f32.gmra.mrb[0].mxu0 %v7902
  %v8176 = vpop.f32.mrb[0].mxu0
  %v8177 = vadd.f32 %v7597, %v8176
  %v8178 = vpop.f32.mrb[0].mxu0
  %8179 = vmatprep.mubr.f32.mxu0 0.0
  %8180 = vmatmul.mubr.f32.gmra.mrb[0].mxu0 %v7905
  %v8181 = vpop.f32.mrb[0].mxu0
  %v8182 = vadd.f32 %v7602, %v8181
  %v8183 = vpop.f32.mrb[0].mxu0
  %8184 = vmatprep.mubr.f32.mxu0 0.0
  %8185 = vmatmul.mubr.f32.gmra.mrb[0].mxu0 %v7908
  %v8186 = vpop.f32.mrb[0].mxu0
  %v8187 = vadd.f32 %v7607, %v8186
  %v8188 = vpop.f32.mrb[0].mxu0
  %8189 = vmatprep.mubr.f32.mxu0 0.0
  %8190 = vmatmul.mubr.f32.gmra.mrb[0].mxu0 %v7911
  %v8191 = vpop.f32.mrb[0].mxu0
  %v8192 = vadd.f32 %v7612, %v8191
  %v8193 = vpop.f32.mrb[0].mxu0
  %8194 = vmatprep.mubr.f32.mxu0 0.0
  %8195 = vmatmul.mubr.f32.gmra.mrb[0].mxu0 %v7914
  %v8196 = vpop.f32.mrb[0].mxu0
  %v8197 = vadd.f32 %v7617, %v8196
  %v8198 = vpop.f32.mrb[0].mxu0
  %8199 = vmatprep.mubr.f32.mxu0 0.0
  %8200 = vmatmul.mubr.f32.gmra.mrb[0].mxu0 %v7917
  %v8201 = vpop.f32.mrb[0].mxu0
  %v8202 = vadd.f32 %v7622, %v8201
  %v8203 = vpop.f32.mrb[0].mxu0
  %8204 = vmatprep.mubr.f32.mxu0 0.0
  %8205 = vmatmul.mubr.f32.gmra.mrb[0].mxu0 %v7920
  %v8206 = vpop.f32.mrb[0].mxu0
  %v8207 = vadd.f32 %v7627, %v8206
  %v8208 = vpop.f32.mrb[0].mxu0
  %8209 = vmatprep.mubr.f32.mxu0 0.0
  %8210 = vmatmul.mubr.f32.gmra.mrb[0].mxu0 %v7923
  %v8211 = vpop.f32.mrb[0].mxu0
  %v8212 = vadd.f32 %v7632, %v8211
  %v8213 = vpop.f32.mrb[0].mxu0
  %8214 = vmatprep.mubr.f32.mxu0 0.0
  %8215 = vmatmul.mubr.f32.gmra.mrb[0].mxu0 %v7926
  %v8216 = vpop.f32.mrb[0].mxu0
  %v8217 = vadd.f32 %v7637, %v8216
  %v8218 = vpop.f32.mrb[0].mxu0
  %8219 = vmatprep.mubr.f32.mxu0 0.0
  %8220 = vmatmul.mubr.f32.gmra.mrb[0].mxu0 %v7929
  %v8221 = vpop.f32.mrb[0].mxu0
  %v8222 = vadd.f32 %v7642, %v8221
  %v8223 = vpop.f32.mrb[0].mxu0
  %8224 = vmatprep.mubr.f32.mxu0 0.0
  %8225 = vmatmul.mubr.f32.gmra.mrb[0].mxu0 %v7932
  %v8226 = vpop.f32.mrb[0].mxu0
  %v8227 = vadd.f32 %v7647, %v8226
  %v8228 = vpop.f32.mrb[0].mxu0
  %8229 = vmatprep.mubr.f32.mxu0 0.0
  %8230 = vmatmul.mubr.f32.gmra.mrb[0].mxu0 %v7935
  %v8231 = vpop.f32.mrb[0].mxu0
  %v8232 = vadd.f32 %v7652, %v8231
  %v8233 = vpop.f32.mrb[0].mxu0
  %8234 = vmatprep.mubr.f32.mxu0 0.0
  %8235 = vmatmul.mubr.f32.gmra.mrb[0].mxu0 %v7938
  %v8236 = vpop.f32.mrb[0].mxu0
  %v8237 = vadd.f32 %v7657, %v8236
  %v8238 = vpop.f32.mrb[0].mxu0
  %8239 = vmatprep.mubr.f32.mxu0 0.0
  %8240 = vmatmul.mubr.f32.gmra.mrb[0].mxu0 %v7941
  %v8241 = vpop.f32.mrb[0].mxu0
  %v8242 = vadd.f32 %v7662, %v8241
  %v8243 = vpop.f32.mrb[0].mxu0
  %8244 = vmatprep.mubr.f32.mxu0 0.0
  %8245 = vmatmul.mubr.f32.gmra.mrb[0].mxu0 %v7944
  %v8246 = vpop.f32.mrb[0].mxu0
  %v8247 = vadd.f32 %v7667, %v8246
  %v8248 = vpop.f32.mrb[0].mxu0
  %8249 = vmatprep.mubr.f32.mxu0 0.0
  %8250 = vmatmul.mubr.f32.gmra.mrb[0].mxu0 %v7947
  %v8251 = vpop.f32.mrb[0].mxu0
  %v8252 = vadd.f32 %v7672, %v8251
  %v8253 = vpop.f32.mrb[0].mxu0
  %8254 = vmatprep.mubr.f32.mxu0 0.0
  %8255 = vmatmul.mubr.f32.gmra.mrb[0].mxu0 %v7950
  %v8256 = vpop.f32.mrb[0].mxu0
  %v8257 = vadd.f32 %v7677, %v8256
  %v8258 = vpop.f32.mrb[0].mxu0
  %8259 = vmatprep.mubr.f32.mxu0 0.0
  %8260 = vmatmul.mubr.f32.gmra.mrb[0].mxu0 %v7953
  %v8261 = vpop.f32.mrb[0].mxu0
  %v8262 = vadd.f32 %v7682, %v8261
  %v8263 = vpop.f32.mrb[0].mxu0
  %8264 = vmatprep.mubr.f32.mxu0 0.0
  %8265 = vmatmul.mubr.f32.gmra.mrb[0].mxu0 %v7956
  %v8266 = vpop.f32.mrb[0].mxu0
  %v8267 = vadd.f32 %v7687, %v8266
  %v8268 = vpop.f32.mrb[0].mxu0
  %8269 = vmatprep.mubr.f32.mxu0 0.0
  %8270 = vmatmul.mubr.f32.gmra.mrb[0].mxu0 %v7959
  %v8271 = vpop.f32.mrb[0].mxu0
  %v8272 = vadd.f32 %v7692, %v8271
  %v8273 = vpop.f32.mrb[0].mxu0
  %8274 = vmatprep.mubr.f32.mxu0 0.0
  %8275 = vmatmul.mubr.f32.gmra.mrb[0].mxu0 %v7962
  %v8276 = vpop.f32.mrb[0].mxu0
  %v8277 = vadd.f32 %v7697, %v8276
  %v8278 = vpop.f32.mrb[0].mxu0
  %8279 = vmatprep.mubr.f32.mxu0 0.0
  %8280 = vmatmul.mubr.f32.gmra.mrb[0].mxu0 %v7965
  %v8281 = vpop.f32.mrb[0].mxu0
  %v8282 = vadd.f32 %v7702, %v8281
  %v8283 = vpop.f32.mrb[0].mxu0
  %8284 = vmatprep.mubr.f32.mxu0 0.0
  %8285 = vmatmul.mubr.f32.gmra.mrb[0].mxu0 %v7968
  %v8286 = vpop.f32.mrb[0].mxu0
  %v8287 = vadd.f32 %v7707, %v8286
  %v8288 = vpop.f32.mrb[0].mxu0
  %8289 = vmatprep.mubr.f32.mxu0 0.0
  %8290 = vmatmul.mubr.f32.gmra.mrb[0].mxu0 %v7971
  %v8291 = vpop.f32.mrb[0].mxu0
  %v8292 = vadd.f32 %v7712, %v8291
  %v8293 = vpop.f32.mrb[0].mxu0
  %8294 = vmatprep.mubr.f32.mxu0 0.0
  %8295 = vmatmul.mubr.f32.gmra.mrb[0].mxu0 %v7974
  %v8296 = vpop.f32.mrb[0].mxu0
  %v8297 = vadd.f32 %v7717, %v8296
  %v8298 = vpop.f32.mrb[0].mxu0
  %8299 = vmatprep.mubr.f32.mxu0 0.0
  %8300 = vmatmul.mubr.f32.gmra.mrb[0].mxu0 %v7977
  %v8301 = vpop.f32.mrb[0].mxu0
  %v8302 = vadd.f32 %v7722, %v8301
  %v8303 = vpop.f32.mrb[0].mxu0
  %8304 = vmatprep.mubr.f32.mxu0 0.0
  %8305 = vmatmul.mubr.f32.gmra.mrb[0].mxu0 %v7980
  %v8306 = vpop.f32.mrb[0].mxu0
  %v8307 = vadd.f32 %v7727, %v8306
  %v8308 = vpop.f32.mrb[0].mxu0
  %8309 = vmatprep.mubr.f32.mxu0 0.0
  %8310 = vmatmul.mubr.f32.gmra.mrb[0].mxu0 %v7983
  %v8311 = vpop.f32.mrb[0].mxu0
  %v8312 = vadd.f32 %v7732, %v8311
  %v8313 = vpop.f32.mrb[0].mxu0
  %8314 = vmatprep.mubr.f32.mxu0 0.0
  %8315 = vmatmul.mubr.f32.gmra.mrb[0].mxu0 %v7986
  %v8316 = vpop.f32.mrb[0].mxu0
  %v8317 = vadd.f32 %v7737, %v8316
  %v8318 = vpop.f32.mrb[0].mxu0
  %8319 = vmatprep.mubr.f32.mxu0 0.0
  %8320 = vmatmul.mubr.f32.gmra.mrb[0].mxu0 %v7989
  %v8321 = vpop.f32.mrb[0].mxu0
  %v8322 = vadd.f32 %v7742, %v8321
  %v8323 = vpop.f32.mrb[0].mxu0
  %8324 = vmatprep.mubr.f32.mxu0 0.0
  %8325 = vmatmul.mubr.f32.gmra.mrb[0].mxu0 %v7992
  %v8326 = vpop.f32.mrb[0].mxu0
  %v8327 = vadd.f32 %v7747, %v8326
  %v8328 = vpop.f32.mrb[0].mxu0
  %8329 = vmatprep.mubr.f32.mxu0 0.0
  %8330 = vmatmul.mubr.f32.gmra.mrb[0].mxu0 %v7995
  %v8331 = vpop.f32.mrb[0].mxu0
  %v8332 = vadd.f32 %v7752, %v8331
  %v8333 = vpop.f32.mrb[0].mxu0
  %8334 = vmatprep.mubr.f32.mxu0 0.0
  %8335 = vmatmul.mubr.f32.gmra.mrb[0].mxu0 %v7998
  %v8336 = vpop.f32.mrb[0].mxu0
  %v8337 = vadd.f32 %v7757, %v8336
  %v8338 = vpop.f32.mrb[0].mxu0
  %8339 = vmatprep.mubr.f32.mxu0 0.0
  %8340 = vmatmul.mubr.f32.gmra.mrb[0].mxu0 %v8001
  %v8341 = vpop.f32.mrb[0].mxu0
  %v8342 = vadd.f32 %v7762, %v8341
  %v8343 = vpop.f32.mrb[0].mxu0
  %8344 = vmatprep.mubr.f32.mxu0 0.0
  %8345 = vmatmul.mubr.f32.gmra.mrb[0].mxu0 %v8004
  %v8346 = vpop.f32.mrb[0].mxu0
  %v8347 = vadd.f32 %v7767, %v8346
  %v8348 = vpop.f32.mrb[0].mxu0
  %8349 = vmatprep.mubr.f32.mxu0 0.0
  %8350 = vmatmul.mubr.f32.gmra.mrb[0].mxu0 %v8007
  %v8351 = vpop.f32.mrb[0].mxu0
  %v8352 = vadd.f32 %v7772, %v8351
  %v8353 = vpop.f32.mrb[0].mxu0
  %8354 = vmatprep.mubr.f32.mxu0 0.0
  %8355 = vmatmul.mubr.f32.gmra.mrb[0].mxu0 %v8010
  %v8356 = vpop.f32.mrb[0].mxu0
  %v8357 = vadd.f32 %v7777, %v8356
  %v8358 = vpop.f32.mrb[0].mxu0
  %8359 = vmatprep.mubr.f32.mxu0 0.0
  %8360 = vmatmul.mubr.f32.gmra.mrb[0].mxu0 %v8013
  %v8361 = vpop.f32.mrb[0].mxu0
  %v8362 = vadd.f32 %v7782, %v8361
  %v8363 = vpop.f32.mrb[0].mxu0
  %8364 = vmatprep.mubr.f32.mxu0 0.0
  %8365 = vmatmul.mubr.f32.gmra.mrb[0].mxu0 %v8016
  %v8366 = vpop.f32.mrb[0].mxu0
  %v8367 = vadd.f32 %v7787, %v8366
  %v8368 = vpop.f32.mrb[0].mxu0
  %8369 = vmatprep.mubr.f32.mxu0 0.0
  %8370 = vmatmul.mubr.f32.gmra.mrb[0].mxu0 %v8019
  %v8371 = vpop.f32.mrb[0].mxu0
  %v8372 = vadd.f32 %v7792, %v8371
  %v8373 = vpop.f32.mrb[0].mxu0
  %8374 = vmatprep.mubr.f32.mxu0 0.0
  %8375 = vmatmul.mubr.f32.gmra.mrb[0].mxu0 %v8022
  %v8376 = vpop.f32.mrb[0].mxu0
  %v8377 = vadd.f32 %v7797, %v8376
  %v8378 = vpop.f32.mrb[0].mxu0
  %8379 = vmatprep.mubr.f32.mxu0 0.0
  %8380 = vmatmul.mubr.f32.gmra.mrb[0].mxu0 %v8025
  %v8381 = vpop.f32.mrb[0].mxu0
  %v8382 = vadd.f32 %v7802, %v8381
  %v8383 = vpop.f32.mrb[0].mxu0
  %8384 = vmatprep.mubr.f32.mxu0 0.0
  %8385 = vmatmul.mubr.f32.gmra.mrb[0].mxu0 %v8028
  %v8386 = vpop.f32.mrb[0].mxu0
  %v8387 = vadd.f32 %v7807, %v8386
  %v8388 = vpop.f32.mrb[0].mxu0
  %8389 = vmatprep.mubr.f32.mxu0 0.0
  %8390 = vmatmul.mubr.f32.gmra.mrb[0].mxu0 %v8031
  %v8391 = vpop.f32.mrb[0].mxu0
  %v8392 = vadd.f32 %v7812, %v8391
  %v8393 = vpop.f32.mrb[0].mxu0
  %8394 = vmatprep.mubr.f32.mxu0 0.0
  %8395 = vmatmul.mubr.f32.gmra.mrb[0].mxu0 %v8034
  %v8396 = vpop.f32.mrb[0].mxu0
  %v8397 = vadd.f32 %v7817, %v8396
  %v8398 = vpop.f32.mrb[0].mxu0
  %8399 = vmatprep.mubr.f32.mxu0 0.0
  %8400 = vmatmul.mubr.f32.gmra.mrb[0].mxu0 %v8037
  %v8401 = vpop.f32.mrb[0].mxu0
  %v8402 = vadd.f32 %v7822, %v8401
  %v8403 = vpop.f32.mrb[0].mxu0
  %8404 = vmatprep.mubr.f32.mxu0 0.0
  %8405 = vmatmul.mubr.f32.gmra.mrb[0].mxu0 %v8040
  %v8406 = vpop.f32.mrb[0].mxu0
  %v8407 = vadd.f32 %v7827, %v8406
  %v8408 = vpop.f32.mrb[0].mxu0
  %8409 = vmatprep.mubr.f32.mxu0 0.0
  %8410 = vmatmul.mubr.f32.gmra.mrb[0].mxu0 %v8043
  %v8411 = vpop.f32.mrb[0].mxu0
  %v8412 = vadd.f32 %v7832, %v8411
  %v8413 = vpop.f32.mrb[0].mxu0
  %8414 = vmatprep.mubr.f32.mxu0 0.0
  %8415 = vmatmul.mubr.f32.gmra.mrb[0].mxu0 %v8046
  %v8416 = vpop.f32.mrb[0].mxu0
  %v8417 = vadd.f32 %v7837, %v8416
  %v8418 = vpop.f32.mrb[0].mxu0
  %8419 = vmatprep.mubr.f32.mxu0 0.0
  %8420 = vmatmul.mubr.f32.gmra.mrb[0].mxu0 %v8049
  %v8421 = vpop.f32.mrb[0].mxu0
  %v8422 = vadd.f32 %v7842, %v8421
  %v8423 = vpop.f32.mrb[0].mxu0
  %8424 = vmatprep.mubr.f32.mxu0 0.0
  %8425 = vmatmul.mubr.f32.gmra.mrb[0].mxu0 %v8052
  %v8426 = vpop.f32.mrb[0].mxu0
  %v8427 = vadd.f32 %v7847, %v8426
  %v8428 = vpop.f32.mrb[0].mxu0
  %8429 = vmatprep.mubr.f32.mxu0 0.0
  %8430 = vmatmul.mubr.f32.gmra.mrb[0].mxu0 %v8055
  %v8431 = vpop.f32.mrb[0].mxu0
  %v8432 = vadd.f32 %v7852, %v8431
  %v8433 = vpop.f32.mrb[0].mxu0
  %8434 = vmatprep.mubr.f32.mxu0 0.0
  %8435 = vmatmul.mubr.f32.gmra.mrb[0].mxu0 %v8058
  %v8436 = vpop.f32.mrb[0].mxu0
  %v8437 = vadd.f32 %v7857, %v8436
  %v8438 = vpop.f32.mrb[0].mxu0
  %8439 = vmatprep.mubr.f32.mxu0 0.0
  %8440 = vmatmul.mubr.f32.gmra.mrb[0].mxu0 %v8061
  %v8441 = vpop.f32.mrb[0].mxu0
  %v8442 = vadd.f32 %v7862, %v8441
  %v8443 = vpop.f32.mrb[0].mxu0
  %8444 = vmatprep.mubr.f32.mxu0 0.0
  %8445 = vmatmul.mubr.f32.gmra.mrb[0].mxu0 %v8064
  %v8446 = vpop.f32.mrb[0].mxu0
  %v8447 = vadd.f32 %v7867, %v8446
  %v8448 = vpop.f32.mrb[0].mxu0
  %8449 = vmatprep.mubr.f32.mxu0 0.0
  %8450 = vmatmul.mubr.f32.gmra.mrb[0].mxu0 %v8067
  %v8451 = vpop.f32.mrb[0].mxu0
  %v8452 = vadd.f32 %v7872, %v8451
  %v8453 = vpop.f32.mrb[0].mxu0
  %8454 = vmatprep.mubr.f32.mxu0 0.0
  %8455 = vmatmul.mubr.f32.gmra.mrb[0].mxu0 %v8070
  %v8456 = vpop.f32.mrb[0].mxu0
  %v8457 = vadd.f32 %v7877, %v8456
  %v8458 = vpop.f32.mrb[0].mxu0
  %8459 = vdwg.mxu0
  %v8460 = vld [vmem:[#allocation2 + $0x2] sm:$0xff]
  %v8461 = vld [vmem:[#allocation2 + $0xa] sm:$0xff]
  %v8462 = vld [vmem:[#allocation2 + $0x1a] sm:$0xff]
  %v8463 = vld [vmem:[#allocation2 + $0x22] sm:$0xff]
  %v8464 = vld [vmem:[#allocation2 + $0x32] sm:$0xff]
  %v8465 = vld [vmem:[#allocation2 + $0x3a] sm:$0xff]
  %v8466 = vld [vmem:[#allocation2 + $0x4a] sm:$0xff]
  %v8467 = vld [vmem:[#allocation2 + $0x52] sm:$0xff]
  %v8468 = vld [vmem:[#allocation2 + $0x62] sm:$0xff]
  %v8469 = vld [vmem:[#allocation2 + $0x6a] sm:$0xff]
  %v8470 = vld [vmem:[#allocation2 + $0x7a] sm:$0xff]
  %v8471 = vld [vmem:[#allocation2 + $0x82] sm:$0xff]
  %v8472 = vld [vmem:[#allocation2 + $0x92] sm:$0xff]
  %v8473 = vld [vmem:[#allocation2 + $0x9a] sm:$0xff]
  %v8474 = vld [vmem:[#allocation2 + $0xaa] sm:$0xff]
  %v8475 = vld [vmem:[#allocation2 + $0xb2] sm:$0xff]
  %v8476 = vld [vmem:[#allocation2 + $0xc2] sm:$0xff]
  %v8477 = vld [vmem:[#allocation2 + $0xca] sm:$0xff]
  %v8478 = vld [vmem:[#allocation2 + $0xda] sm:$0xff]
  %v8479 = vld [vmem:[#allocation2 + $0xe2] sm:$0xff]
  %v8480 = vld [vmem:[#allocation2 + $0xf2] sm:$0xff]
  %v8481 = vld [vmem:[#allocation2 + $0xfa] sm:$0xff]
  %v8482 = vld [vmem:[#allocation2 + $0x10a] sm:$0xff]
  %v8483 = vld [vmem:[#allocation2 + $0x112] sm:$0xff]
  %v8484 = vld [vmem:[#allocation2 + $0x122] sm:$0xff]
  %v8485 = vld [vmem:[#allocation2 + $0x12a] sm:$0xff]
  %v8486 = vld [vmem:[#allocation2 + $0x13a] sm:$0xff]
  %v8487 = vld [vmem:[#allocation2 + $0x142] sm:$0xff]
  %v8488 = vld [vmem:[#allocation2 + $0x152] sm:$0xff]
  %v8489 = vld [vmem:[#allocation2 + $0x15a] sm:$0xff]
  %v8490 = vld [vmem:[#allocation2 + $0x16a] sm:$0xff]
  %v8491 = vld [vmem:[#allocation2 + $0x172] sm:$0xff]
  %v8492 = vld [vmem:[#allocation2 + $0x1b2] sm:$0xff]
  %v8493 = vld [vmem:[#allocation2 + $0x1ba] sm:$0xff]
  %v8494 = vld [vmem:[#allocation2 + $0x1ca] sm:$0xff]
  %v8495 = vld [vmem:[#allocation2 + $0x1d2] sm:$0xff]
  %v8496 = vld [vmem:[#allocation2 + $0x1e2] sm:$0xff]
  %v8497 = vld [vmem:[#allocation2 + $0x1ea] sm:$0xff]
  %v8498 = vld [vmem:[#allocation2 + $0x1fa] sm:$0xff]
  %v8499 = vld [vmem:[#allocation2 + $0x202] sm:$0xff]
  %v8500 = vld [vmem:[#allocation2 + $0x212] sm:$0xff]
  %v8501 = vld [vmem:[#allocation2 + $0x21a] sm:$0xff]
  %v8502 = vld [vmem:[#allocation2 + $0x22a] sm:$0xff]
  %v8503 = vld [vmem:[#allocation2 + $0x232] sm:$0xff]
  %v8504 = vld [vmem:[#allocation2 + $0x242] sm:$0xff]
  %v8505 = vld [vmem:[#allocation2 + $0x24a] sm:$0xff]
  %v8506 = vld [vmem:[#allocation2 + $0x25a] sm:$0xff]
  %v8507 = vld [vmem:[#allocation2 + $0x262] sm:$0xff]
  %v8508 = vld [vmem:[#allocation2 + $0x272] sm:$0xff]
  %v8509 = vld [vmem:[#allocation2 + $0x27a] sm:$0xff]
  %v8510 = vld [vmem:[#allocation2 + $0x28a] sm:$0xff]
  %v8511 = vld [vmem:[#allocation2 + $0x292] sm:$0xff]
  %v8512 = vld [vmem:[#allocation2 + $0x2a2] sm:$0xff]
  %v8513 = vld [vmem:[#allocation2 + $0x2aa] sm:$0xff]
  %v8514 = vld [vmem:[#allocation2 + $0x2ba] sm:$0xff]
  %v8515 = vld [vmem:[#allocation2 + $0x2c2] sm:$0xff]
  %v8516 = vld [vmem:[#allocation2 + $0x2d2] sm:$0xff]
  %v8517 = vld [vmem:[#allocation2 + $0x2da] sm:$0xff]
  %v8518 = vld [vmem:[#allocation2 + $0x2ea] sm:$0xff]
  %v8519 = vld [vmem:[#allocation2 + $0x2f2] sm:$0xff]
  %v8520 = vld [vmem:[#allocation2 + $0x302] sm:$0xff]
  %v8521 = vld [vmem:[#allocation2 + $0x30a] sm:$0xff]
  %v8522 = vld [vmem:[#allocation2 + $0x31a] sm:$0xff]
  %v8523 = vld [vmem:[#allocation2 + $0x322] sm:$0xff]
  %s8524 = scalar_lea.vmem %s2, 8
  %v8525 = vld [vmem:[%s8524] sm:$0xf]
  %v8527 = vsel %vm90, %v8460, 0
  %v8530 = vsel %vm90, %v8461, 0
  %v8533 = vsel %vm90, %v8462, 0
  %v8536 = vsel %vm90, %v8463, 0
  %v8539 = vsel %vm90, %v8464, 0
  %v8542 = vsel %vm90, %v8465, 0
  %v8545 = vsel %vm90, %v8466, 0
  %v8548 = vsel %vm90, %v8467, 0
  %v8551 = vsel %vm90, %v8468, 0
  %v8554 = vsel %vm90, %v8469, 0
  %v8557 = vsel %vm90, %v8470, 0
  %v8560 = vsel %vm90, %v8471, 0
  %v8563 = vsel %vm90, %v8472, 0
  %v8566 = vsel %vm90, %v8473, 0
  %v8569 = vsel %vm90, %v8474, 0
  %v8572 = vsel %vm90, %v8475, 0
  %v8575 = vsel %vm90, %v8476, 0
  %v8578 = vsel %vm90, %v8477, 0
  %v8581 = vsel %vm90, %v8478, 0
  %v8584 = vsel %vm90, %v8479, 0
  %v8587 = vsel %vm90, %v8480, 0
  %v8590 = vsel %vm90, %v8481, 0
  %v8593 = vsel %vm90, %v8482, 0
  %v8596 = vsel %vm90, %v8483, 0
  %v8599 = vsel %vm90, %v8484, 0
  %v8602 = vsel %vm90, %v8485, 0
  %v8605 = vsel %vm90, %v8486, 0
  %v8608 = vsel %vm90, %v8487, 0
  %v8611 = vsel %vm90, %v8488, 0
  %v8614 = vsel %vm90, %v8489, 0
  %v8617 = vsel %vm90, %v8490, 0
  %v8620 = vsel %vm90, %v8491, 0
  %v8623 = vsel %vm90, %v8492, 0
  %v8626 = vsel %vm90, %v8493, 0
  %v8629 = vsel %vm90, %v8494, 0
  %v8632 = vsel %vm90, %v8495, 0
  %v8635 = vsel %vm90, %v8496, 0
  %v8638 = vsel %vm90, %v8497, 0
  %v8641 = vsel %vm90, %v8498, 0
  %v8644 = vsel %vm90, %v8499, 0
  %v8647 = vsel %vm90, %v8500, 0
  %v8650 = vsel %vm90, %v8501, 0
  %v8653 = vsel %vm90, %v8502, 0
  %v8656 = vsel %vm90, %v8503, 0
  %v8659 = vsel %vm90, %v8504, 0
  %v8662 = vsel %vm90, %v8505, 0
  %v8665 = vsel %vm90, %v8506, 0
  %v8668 = vsel %vm90, %v8507, 0
  %v8671 = vsel %vm90, %v8508, 0
  %v8674 = vsel %vm90, %v8509, 0
  %v8677 = vsel %vm90, %v8510, 0
  %v8680 = vsel %vm90, %v8511, 0
  %v8683 = vsel %vm90, %v8512, 0
  %v8686 = vsel %vm90, %v8513, 0
  %v8689 = vsel %vm90, %v8514, 0
  %v8692 = vsel %vm90, %v8515, 0
  %v8695 = vsel %vm90, %v8516, 0
  %v8698 = vsel %vm90, %v8517, 0
  %v8701 = vsel %vm90, %v8518, 0
  %v8704 = vsel %vm90, %v8519, 0
  %v8707 = vsel %vm90, %v8520, 0
  %v8710 = vsel %vm90, %v8521, 0
  %v8713 = vsel %vm90, %v8522, 0
  %v8716 = vsel %vm90, %v8523, 0
  %v8719 = vsel %vm560, %v8525, 0
  %8721 = vmatprep.subr.mxu0 0.0
  %8722 = vmatpush1.msra.mxu0 %v8719
  %8723 = vmatprep.subr.mxu0 0.0
  %8724 = vmatpush1.msra.mxu0 0.0
  %8725 = vmatprep.subr.mxu0 0.0
  %8726 = vmatpush1.msra.mxu0 0.0
  %8727 = vmatprep.subr.mxu0 0.0
  %8728 = vmatpush1.msra.mxu0 0.0
  %8729 = vmatprep.subr.mxu0 0.0
  %8730 = vmatpush1.msra.mxu0 0.0
  %8731 = vmatprep.subr.mxu0 0.0
  %8732 = vmatpush1.msra.mxu0 0.0
  %8733 = vmatprep.subr.mxu0 0.0
  %8734 = vmatpush1.msra.mxu0 0.0
  %8735 = vmatprep.subr.mxu0 0.0
  %8736 = vmatpush1.msra.mxu0 0.0
  %8737 = vmatprep.subr.mxu0 0.0
  %8738 = vmatpush1.msra.mxu0 0.0
  %8739 = vmatprep.subr.mxu0 0.0
  %8740 = vmatpush1.msra.mxu0 0.0
  %8741 = vmatprep.subr.mxu0 0.0
  %8742 = vmatpush1.msra.mxu0 0.0
  %8743 = vmatprep.subr.mxu0 0.0
  %8744 = vmatpush1.msra.mxu0 0.0
  %8745 = vmatprep.subr.mxu0 0.0
  %8746 = vmatpush1.msra.mxu0 0.0
  %8747 = vmatprep.subr.mxu0 0.0
  %8748 = vmatpush1.msra.mxu0 0.0
  %8749 = vmatprep.subr.mxu0 0.0
  %8750 = vmatpush1.msra.mxu0 0.0
  %8751 = vmatprep.subr.mxu0 0.0
  %8752 = vmatpush1.msra.mxu0 0.0
  %8753 = vmatprep.subr.mxu0 0.0
  %8754 = vmatpush1.msra.mxu0 0.0
  %8755 = vmatprep.subr.mxu0 0.0
  %8756 = vmatpush1.msra.mxu0 0.0
  %8757 = vmatprep.subr.mxu0 0.0
  %8758 = vmatpush1.msra.mxu0 0.0
  %8759 = vmatprep.subr.mxu0 0.0
  %8760 = vmatpush1.msra.mxu0 0.0
  %8761 = vmatprep.subr.mxu0 0.0
  %8762 = vmatpush1.msra.mxu0 0.0
  %8763 = vmatprep.subr.mxu0 0.0
  %8764 = vmatpush1.msra.mxu0 0.0
  %8765 = vmatprep.subr.mxu0 0.0
  %8766 = vmatpush1.msra.mxu0 0.0
  %8767 = vmatprep.subr.mxu0 0.0
  %8768 = vmatpush1.msra.mxu0 0.0
  %8769 = vmatprep.subr.mxu0 0.0
  %8770 = vmatpush1.msra.mxu0 0.0
  %8771 = vmatprep.subr.mxu0 0.0
  %8772 = vmatpush1.msra.mxu0 0.0
  %8773 = vmatprep.subr.mxu0 0.0
  %8774 = vmatpush1.msra.mxu0 0.0
  %8775 = vmatprep.subr.mxu0 0.0
  %8776 = vmatpush1.msra.mxu0 0.0
  %8777 = vmatprep.subr.mxu0 0.0
  %8778 = vmatpush1.msra.mxu0 0.0
  %8779 = vmatprep.subr.mxu0 0.0
  %8780 = vmatpush1.msra.mxu0 0.0
  %8781 = vmatprep.subr.mxu0 0.0
  %8782 = vmatpush1.msra.mxu0 0.0
  %8783 = vmatprep.subr.mxu0 0.0
  %8784 = vmatpush1.msra.mxu0 0.0
  %8785 = vmatprep.mubr.f32.mxu0 0.0
  %8786 = vmatmul.mubr.f32.gmra.mrb[0].mxu0 %v8527
  %v8787 = vpop.f32.mrb[0].mxu0
  %v8788 = vadd.f32 0.0, %v8787
  %v8789 = vpop.f32.mrb[0].mxu0
  %8790 = vmatprep.mubr.f32.mxu0 0.0
  %8791 = vmatmul.mubr.f32.gmra.mrb[0].mxu0 %v8530
  %v8792 = vpop.f32.mrb[0].mxu0
  %v8793 = vadd.f32 0.0, %v8792
  %v8794 = vpop.f32.mrb[0].mxu0
  %8795 = vmatprep.mubr.f32.mxu0 0.0
  %8796 = vmatmul.mubr.f32.gmra.mrb[0].mxu0 %v8533
  %v8797 = vpop.f32.mrb[0].mxu0
  %v8798 = vadd.f32 0.0, %v8797
  %v8799 = vpop.f32.mrb[0].mxu0
  %8800 = vmatprep.mubr.f32.mxu0 0.0
  %8801 = vmatmul.mubr.f32.gmra.mrb[0].mxu0 %v8536
  %v8802 = vpop.f32.mrb[0].mxu0
  %v8803 = vadd.f32 0.0, %v8802
  %v8804 = vpop.f32.mrb[0].mxu0
  %8805 = vmatprep.mubr.f32.mxu0 0.0
  %8806 = vmatmul.mubr.f32.gmra.mrb[0].mxu0 %v8539
  %v8807 = vpop.f32.mrb[0].mxu0
  %v8808 = vadd.f32 0.0, %v8807
  %v8809 = vpop.f32.mrb[0].mxu0
  %8810 = vmatprep.mubr.f32.mxu0 0.0
  %8811 = vmatmul.mubr.f32.gmra.mrb[0].mxu0 %v8542
  %v8812 = vpop.f32.mrb[0].mxu0
  %v8813 = vadd.f32 0.0, %v8812
  %v8814 = vpop.f32.mrb[0].mxu0
  %8815 = vmatprep.mubr.f32.mxu0 0.0
  %8816 = vmatmul.mubr.f32.gmra.mrb[0].mxu0 %v8545
  %v8817 = vpop.f32.mrb[0].mxu0
  %v8818 = vadd.f32 0.0, %v8817
  %v8819 = vpop.f32.mrb[0].mxu0
  %8820 = vmatprep.mubr.f32.mxu0 0.0
  %8821 = vmatmul.mubr.f32.gmra.mrb[0].mxu0 %v8548
  %v8822 = vpop.f32.mrb[0].mxu0
  %v8823 = vadd.f32 0.0, %v8822
  %v8824 = vpop.f32.mrb[0].mxu0
  %8825 = vmatprep.mubr.f32.mxu0 0.0
  %8826 = vmatmul.mubr.f32.gmra.mrb[0].mxu0 %v8551
  %v8827 = vpop.f32.mrb[0].mxu0
  %v8828 = vadd.f32 0.0, %v8827
  %v8829 = vpop.f32.mrb[0].mxu0
  %8830 = vmatprep.mubr.f32.mxu0 0.0
  %8831 = vmatmul.mubr.f32.gmra.mrb[0].mxu0 %v8554
  %v8832 = vpop.f32.mrb[0].mxu0
  %v8833 = vadd.f32 0.0, %v8832
  %v8834 = vpop.f32.mrb[0].mxu0
  %8835 = vmatprep.mubr.f32.mxu0 0.0
  %8836 = vmatmul.mubr.f32.gmra.mrb[0].mxu0 %v8557
  %v8837 = vpop.f32.mrb[0].mxu0
  %v8838 = vadd.f32 0.0, %v8837
  %v8839 = vpop.f32.mrb[0].mxu0
  %8840 = vmatprep.mubr.f32.mxu0 0.0
  %8841 = vmatmul.mubr.f32.gmra.mrb[0].mxu0 %v8560
  %v8842 = vpop.f32.mrb[0].mxu0
  %v8843 = vadd.f32 0.0, %v8842
  %v8844 = vpop.f32.mrb[0].mxu0
  %8845 = vmatprep.mubr.f32.mxu0 0.0
  %8846 = vmatmul.mubr.f32.gmra.mrb[0].mxu0 %v8563
  %v8847 = vpop.f32.mrb[0].mxu0
  %v8848 = vadd.f32 0.0, %v8847
  %v8849 = vpop.f32.mrb[0].mxu0
  %8850 = vmatprep.mubr.f32.mxu0 0.0
  %8851 = vmatmul.mubr.f32.gmra.mrb[0].mxu0 %v8566
  %v8852 = vpop.f32.mrb[0].mxu0
  %v8853 = vadd.f32 0.0, %v8852
  %v8854 = vpop.f32.mrb[0].mxu0
  %8855 = vmatprep.mubr.f32.mxu0 0.0
  %8856 = vmatmul.mubr.f32.gmra.mrb[0].mxu0 %v8569
  %v8857 = vpop.f32.mrb[0].mxu0
  %v8858 = vadd.f32 0.0, %v8857
  %v8859 = vpop.f32.mrb[0].mxu0
  %8860 = vmatprep.mubr.f32.mxu0 0.0
  %8861 = vmatmul.mubr.f32.gmra.mrb[0].mxu0 %v8572
  %v8862 = vpop.f32.mrb[0].mxu0
  %v8863 = vadd.f32 0.0, %v8862
  %v8864 = vpop.f32.mrb[0].mxu0
  %8865 = vmatprep.mubr.f32.mxu0 0.0
  %8866 = vmatmul.mubr.f32.gmra.mrb[0].mxu0 %v8575
  %v8867 = vpop.f32.mrb[0].mxu0
  %v8868 = vadd.f32 0.0, %v8867
  %v8869 = vpop.f32.mrb[0].mxu0
  %8870 = vmatprep.mubr.f32.mxu0 0.0
  %8871 = vmatmul.mubr.f32.gmra.mrb[0].mxu0 %v8578
  %v8872 = vpop.f32.mrb[0].mxu0
  %v8873 = vadd.f32 0.0, %v8872
  %v8874 = vpop.f32.mrb[0].mxu0
  %8875 = vmatprep.mubr.f32.mxu0 0.0
  %8876 = vmatmul.mubr.f32.gmra.mrb[0].mxu0 %v8581
  %v8877 = vpop.f32.mrb[0].mxu0
  %v8878 = vadd.f32 0.0, %v8877
  %v8879 = vpop.f32.mrb[0].mxu0
  %8880 = vmatprep.mubr.f32.mxu0 0.0
  %8881 = vmatmul.mubr.f32.gmra.mrb[0].mxu0 %v8584
  %v8882 = vpop.f32.mrb[0].mxu0
  %v8883 = vadd.f32 0.0, %v8882
  %v8884 = vpop.f32.mrb[0].mxu0
  %8885 = vmatprep.mubr.f32.mxu0 0.0
  %8886 = vmatmul.mubr.f32.gmra.mrb[0].mxu0 %v8587
  %v8887 = vpop.f32.mrb[0].mxu0
  %v8888 = vadd.f32 0.0, %v8887
  %v8889 = vpop.f32.mrb[0].mxu0
  %8890 = vmatprep.mubr.f32.mxu0 0.0
  %8891 = vmatmul.mubr.f32.gmra.mrb[0].mxu0 %v8590
  %v8892 = vpop.f32.mrb[0].mxu0
  %v8893 = vadd.f32 0.0, %v8892
  %v8894 = vpop.f32.mrb[0].mxu0
  %8895 = vmatprep.mubr.f32.mxu0 0.0
  %8896 = vmatmul.mubr.f32.gmra.mrb[0].mxu0 %v8593
  %v8897 = vpop.f32.mrb[0].mxu0
  %v8898 = vadd.f32 0.0, %v8897
  %v8899 = vpop.f32.mrb[0].mxu0
  %8900 = vmatprep.mubr.f32.mxu0 0.0
  %8901 = vmatmul.mubr.f32.gmra.mrb[0].mxu0 %v8596
  %v8902 = vpop.f32.mrb[0].mxu0
  %v8903 = vadd.f32 0.0, %v8902
  %v8904 = vpop.f32.mrb[0].mxu0
  %8905 = vmatprep.mubr.f32.mxu0 0.0
  %8906 = vmatmul.mubr.f32.gmra.mrb[0].mxu0 %v8599
  %v8907 = vpop.f32.mrb[0].mxu0
  %v8908 = vadd.f32 0.0, %v8907
  %v8909 = vpop.f32.mrb[0].mxu0
  %8910 = vmatprep.mubr.f32.mxu0 0.0
  %8911 = vmatmul.mubr.f32.gmra.mrb[0].mxu0 %v8602
  %v8912 = vpop.f32.mrb[0].mxu0
  %v8913 = vadd.f32 0.0, %v8912
  %v8914 = vpop.f32.mrb[0].mxu0
  %8915 = vmatprep.mubr.f32.mxu0 0.0
  %8916 = vmatmul.mubr.f32.gmra.mrb[0].mxu0 %v8605
  %v8917 = vpop.f32.mrb[0].mxu0
  %v8918 = vadd.f32 0.0, %v8917
  %v8919 = vpop.f32.mrb[0].mxu0
  %8920 = vmatprep.mubr.f32.mxu0 0.0
  %8921 = vmatmul.mubr.f32.gmra.mrb[0].mxu0 %v8608
  %v8922 = vpop.f32.mrb[0].mxu0
  %v8923 = vadd.f32 0.0, %v8922
  %v8924 = vpop.f32.mrb[0].mxu0
  %8925 = vmatprep.mubr.f32.mxu0 0.0
  %8926 = vmatmul.mubr.f32.gmra.mrb[0].mxu0 %v8611
  %v8927 = vpop.f32.mrb[0].mxu0
  %v8928 = vadd.f32 0.0, %v8927
  %v8929 = vpop.f32.mrb[0].mxu0
  %8930 = vmatprep.mubr.f32.mxu0 0.0
  %8931 = vmatmul.mubr.f32.gmra.mrb[0].mxu0 %v8614
  %v8932 = vpop.f32.mrb[0].mxu0
  %v8933 = vadd.f32 0.0, %v8932
  %v8934 = vpop.f32.mrb[0].mxu0
  %8935 = vmatprep.mubr.f32.mxu0 0.0
  %8936 = vmatmul.mubr.f32.gmra.mrb[0].mxu0 %v8617
  %v8937 = vpop.f32.mrb[0].mxu0
  %v8938 = vadd.f32 0.0, %v8937
  %v8939 = vpop.f32.mrb[0].mxu0
  %8940 = vmatprep.mubr.f32.mxu0 0.0
  %8941 = vmatmul.mubr.f32.gmra.mrb[0].mxu0 %v8620
  %v8942 = vpop.f32.mrb[0].mxu0
  %v8943 = vadd.f32 0.0, %v8942
  %v8944 = vpop.f32.mrb[0].mxu0
  %8945 = vmatprep.mubr.f32.mxu0 0.0
  %8946 = vmatmul.mubr.f32.gmra.mrb[0].mxu0 %v8623
  %v8947 = vpop.f32.mrb[0].mxu0
  %v8948 = vadd.f32 0.0, %v8947
  %v8949 = vpop.f32.mrb[0].mxu0
  %8950 = vmatprep.mubr.f32.mxu0 0.0
  %8951 = vmatmul.mubr.f32.gmra.mrb[0].mxu0 %v8626
  %v8952 = vpop.f32.mrb[0].mxu0
  %v8953 = vadd.f32 0.0, %v8952
  %v8954 = vpop.f32.mrb[0].mxu0
  %8955 = vmatprep.mubr.f32.mxu0 0.0
  %8956 = vmatmul.mubr.f32.gmra.mrb[0].mxu0 %v8629
  %v8957 = vpop.f32.mrb[0].mxu0
  %v8958 = vadd.f32 0.0, %v8957
  %v8959 = vpop.f32.mrb[0].mxu0
  %8960 = vmatprep.mubr.f32.mxu0 0.0
  %8961 = vmatmul.mubr.f32.gmra.mrb[0].mxu0 %v8632
  %v8962 = vpop.f32.mrb[0].mxu0
  %v8963 = vadd.f32 0.0, %v8962
  %v8964 = vpop.f32.mrb[0].mxu0
  %8965 = vmatprep.mubr.f32.mxu0 0.0
  %8966 = vmatmul.mubr.f32.gmra.mrb[0].mxu0 %v8635
  %v8967 = vpop.f32.mrb[0].mxu0
  %v8968 = vadd.f32 0.0, %v8967
  %v8969 = vpop.f32.mrb[0].mxu0
  %8970 = vmatprep.mubr.f32.mxu0 0.0
  %8971 = vmatmul.mubr.f32.gmra.mrb[0].mxu0 %v8638
  %v8972 = vpop.f32.mrb[0].mxu0
  %v8973 = vadd.f32 0.0, %v8972
  %v8974 = vpop.f32.mrb[0].mxu0
  %8975 = vmatprep.mubr.f32.mxu0 0.0
  %8976 = vmatmul.mubr.f32.gmra.mrb[0].mxu0 %v8641
  %v8977 = vpop.f32.mrb[0].mxu0
  %v8978 = vadd.f32 0.0, %v8977
  %v8979 = vpop.f32.mrb[0].mxu0
  %8980 = vmatprep.mubr.f32.mxu0 0.0
  %8981 = vmatmul.mubr.f32.gmra.mrb[0].mxu0 %v8644
  %v8982 = vpop.f32.mrb[0].mxu0
  %v8983 = vadd.f32 0.0, %v8982
  %v8984 = vpop.f32.mrb[0].mxu0
  %8985 = vmatprep.mubr.f32.mxu0 0.0
  %8986 = vmatmul.mubr.f32.gmra.mrb[0].mxu0 %v8647
  %v8987 = vpop.f32.mrb[0].mxu0
  %v8988 = vadd.f32 0.0, %v8987
  %v8989 = vpop.f32.mrb[0].mxu0
  %8990 = vmatprep.mubr.f32.mxu0 0.0
  %8991 = vmatmul.mubr.f32.gmra.mrb[0].mxu0 %v8650
  %v8992 = vpop.f32.mrb[0].mxu0
  %v8993 = vadd.f32 0.0, %v8992
  %v8994 = vpop.f32.mrb[0].mxu0
  %8995 = vmatprep.mubr.f32.mxu0 0.0
  %8996 = vmatmul.mubr.f32.gmra.mrb[0].mxu0 %v8653
  %v8997 = vpop.f32.mrb[0].mxu0
  %v8998 = vadd.f32 0.0, %v8997
  %v8999 = vpop.f32.mrb[0].mxu0
  %9000 = vmatprep.mubr.f32.mxu0 0.0
  %9001 = vmatmul.mubr.f32.gmra.mrb[0].mxu0 %v8656
  %v9002 = vpop.f32.mrb[0].mxu0
  %v9003 = vadd.f32 0.0, %v9002
  %v9004 = vpop.f32.mrb[0].mxu0
  %9005 = vmatprep.mubr.f32.mxu0 0.0
  %9006 = vmatmul.mubr.f32.gmra.mrb[0].mxu0 %v8659
  %v9007 = vpop.f32.mrb[0].mxu0
  %v9008 = vadd.f32 0.0, %v9007
  %v9009 = vpop.f32.mrb[0].mxu0
  %9010 = vmatprep.mubr.f32.mxu0 0.0
  %9011 = vmatmul.mubr.f32.gmra.mrb[0].mxu0 %v8662
  %v9012 = vpop.f32.mrb[0].mxu0
  %v9013 = vadd.f32 0.0, %v9012
  %v9014 = vpop.f32.mrb[0].mxu0
  %9015 = vmatprep.mubr.f32.mxu0 0.0
  %9016 = vmatmul.mubr.f32.gmra.mrb[0].mxu0 %v8665
  %v9017 = vpop.f32.mrb[0].mxu0
  %v9018 = vadd.f32 0.0, %v9017
  %v9019 = vpop.f32.mrb[0].mxu0
  %9020 = vmatprep.mubr.f32.mxu0 0.0
  %9021 = vmatmul.mubr.f32.gmra.mrb[0].mxu0 %v8668
  %v9022 = vpop.f32.mrb[0].mxu0
  %v9023 = vadd.f32 0.0, %v9022
  %v9024 = vpop.f32.mrb[0].mxu0
  %9025 = vmatprep.mubr.f32.mxu0 0.0
  %9026 = vmatmul.mubr.f32.gmra.mrb[0].mxu0 %v8671
  %v9027 = vpop.f32.mrb[0].mxu0
  %v9028 = vadd.f32 0.0, %v9027
  %v9029 = vpop.f32.mrb[0].mxu0
  %9030 = vmatprep.mubr.f32.mxu0 0.0
  %9031 = vmatmul.mubr.f32.gmra.mrb[0].mxu0 %v8674
  %v9032 = vpop.f32.mrb[0].mxu0
  %v9033 = vadd.f32 0.0, %v9032
  %v9034 = vpop.f32.mrb[0].mxu0
  %9035 = vmatprep.mubr.f32.mxu0 0.0
  %9036 = vmatmul.mubr.f32.gmra.mrb[0].mxu0 %v8677
  %v9037 = vpop.f32.mrb[0].mxu0
  %v9038 = vadd.f32 0.0, %v9037
  %v9039 = vpop.f32.mrb[0].mxu0
  %9040 = vmatprep.mubr.f32.mxu0 0.0
  %9041 = vmatmul.mubr.f32.gmra.mrb[0].mxu0 %v8680
  %v9042 = vpop.f32.mrb[0].mxu0
  %v9043 = vadd.f32 0.0, %v9042
  %v9044 = vpop.f32.mrb[0].mxu0
  %9045 = vmatprep.mubr.f32.mxu0 0.0
  %9046 = vmatmul.mubr.f32.gmra.mrb[0].mxu0 %v8683
  %v9047 = vpop.f32.mrb[0].mxu0
  %v9048 = vadd.f32 0.0, %v9047
  %v9049 = vpop.f32.mrb[0].mxu0
  %9050 = vmatprep.mubr.f32.mxu0 0.0
  %9051 = vmatmul.mubr.f32.gmra.mrb[0].mxu0 %v8686
  %v9052 = vpop.f32.mrb[0].mxu0
  %v9053 = vadd.f32 0.0, %v9052
  %v9054 = vpop.f32.mrb[0].mxu0
  %9055 = vmatprep.mubr.f32.mxu0 0.0
  %9056 = vmatmul.mubr.f32.gmra.mrb[0].mxu0 %v8689
  %v9057 = vpop.f32.mrb[0].mxu0
  %v9058 = vadd.f32 0.0, %v9057
  %v9059 = vpop.f32.mrb[0].mxu0
  %9060 = vmatprep.mubr.f32.mxu0 0.0
  %9061 = vmatmul.mubr.f32.gmra.mrb[0].mxu0 %v8692
  %v9062 = vpop.f32.mrb[0].mxu0
  %v9063 = vadd.f32 0.0, %v9062
  %v9064 = vpop.f32.mrb[0].mxu0
  %9065 = vmatprep.mubr.f32.mxu0 0.0
  %9066 = vmatmul.mubr.f32.gmra.mrb[0].mxu0 %v8695
  %v9067 = vpop.f32.mrb[0].mxu0
  %v9068 = vadd.f32 0.0, %v9067
  %v9069 = vpop.f32.mrb[0].mxu0
  %9070 = vmatprep.mubr.f32.mxu0 0.0
  %9071 = vmatmul.mubr.f32.gmra.mrb[0].mxu0 %v8698
  %v9072 = vpop.f32.mrb[0].mxu0
  %v9073 = vadd.f32 0.0, %v9072
  %v9074 = vpop.f32.mrb[0].mxu0
  %9075 = vmatprep.mubr.f32.mxu0 0.0
  %9076 = vmatmul.mubr.f32.gmra.mrb[0].mxu0 %v8701
  %v9077 = vpop.f32.mrb[0].mxu0
  %v9078 = vadd.f32 0.0, %v9077
  %v9079 = vpop.f32.mrb[0].mxu0
  %9080 = vmatprep.mubr.f32.mxu0 0.0
  %9081 = vmatmul.mubr.f32.gmra.mrb[0].mxu0 %v8704
  %v9082 = vpop.f32.mrb[0].mxu0
  %v9083 = vadd.f32 0.0, %v9082
  %v9084 = vpop.f32.mrb[0].mxu0
  %9085 = vmatprep.mubr.f32.mxu0 0.0
  %9086 = vmatmul.mubr.f32.gmra.mrb[0].mxu0 %v8707
  %v9087 = vpop.f32.mrb[0].mxu0
  %v9088 = vadd.f32 0.0, %v9087
  %v9089 = vpop.f32.mrb[0].mxu0
  %9090 = vmatprep.mubr.f32.mxu0 0.0
  %9091 = vmatmul.mubr.f32.gmra.mrb[0].mxu0 %v8710
  %v9092 = vpop.f32.mrb[0].mxu0
  %v9093 = vadd.f32 0.0, %v9092
  %v9094 = vpop.f32.mrb[0].mxu0
  %9095 = vmatprep.mubr.f32.mxu0 0.0
  %9096 = vmatmul.mubr.f32.gmra.mrb[0].mxu0 %v8713
  %v9097 = vpop.f32.mrb[0].mxu0
  %v9098 = vadd.f32 0.0, %v9097
  %v9099 = vpop.f32.mrb[0].mxu0
  %9100 = vmatprep.mubr.f32.mxu0 0.0
  %9101 = vmatmul.mubr.f32.gmra.mrb[0].mxu0 %v8716
  %v9102 = vpop.f32.mrb[0].mxu0
  %v9103 = vadd.f32 0.0, %v9102
  %v9104 = vpop.f32.mrb[0].mxu0
  %9105 = vdwg.mxu0
  %v9106 = vadd.f32 %v8142, %v8788
  %v9107 = vadd.f32 %v8147, %v8793
  %v9108 = vadd.f32 %v8152, %v8798
  %v9109 = vadd.f32 %v8157, %v8803
  %v9110 = vadd.f32 %v8162, %v8808
  %v9111 = vadd.f32 %v8167, %v8813
  %v9112 = vadd.f32 %v8172, %v8818
  %v9113 = vadd.f32 %v8177, %v8823
  %v9114 = vadd.f32 %v8182, %v8828
  %v9115 = vadd.f32 %v8187, %v8833
  %v9116 = vadd.f32 %v8192, %v8838
  %v9117 = vadd.f32 %v8197, %v8843
  %v9118 = vadd.f32 %v8202, %v8848
  %v9119 = vadd.f32 %v8207, %v8853
  %v9120 = vadd.f32 %v8212, %v8858
  %v9121 = vadd.f32 %v8217, %v8863
  %v9122 = vadd.f32 %v8222, %v8868
  %v9123 = vadd.f32 %v8227, %v8873
  %v9124 = vadd.f32 %v8232, %v8878
  %v9125 = vadd.f32 %v8237, %v8883
  %v9126 = vadd.f32 %v8242, %v8888
  %v9127 = vadd.f32 %v8247, %v8893
  %v9128 = vadd.f32 %v8252, %v8898
  %v9129 = vadd.f32 %v8257, %v8903
  %v9130 = vadd.f32 %v8262, %v8908
  %v9131 = vadd.f32 %v8267, %v8913
  %v9132 = vadd.f32 %v8272, %v8918
  %v9133 = vadd.f32 %v8277, %v8923
  %v9134 = vadd.f32 %v8282, %v8928
  %v9135 = vadd.f32 %v8287, %v8933
  %v9136 = vadd.f32 %v8292, %v8938
  %v9137 = vadd.f32 %v8297, %v8943
  %v9138 = vadd.f32 %v8302, %v8948
  %v9139 = vadd.f32 %v8307, %v8953
  %v9140 = vadd.f32 %v8312, %v8958
  %v9141 = vadd.f32 %v8317, %v8963
  %v9142 = vadd.f32 %v8322, %v8968
  %v9143 = vadd.f32 %v8327, %v8973
  %v9144 = vadd.f32 %v8332, %v8978
  %v9145 = vadd.f32 %v8337, %v8983
  %v9146 = vadd.f32 %v8342, %v8988
  %v9147 = vadd.f32 %v8347, %v8993
  %v9148 = vadd.f32 %v8352, %v8998
  %v9149 = vadd.f32 %v8357, %v9003
  %v9150 = vadd.f32 %v8362, %v9008
  %v9151 = vadd.f32 %v8367, %v9013
  %v9152 = vadd.f32 %v8372, %v9018
  %v9153 = vadd.f32 %v8377, %v9023
  %v9154 = vadd.f32 %v8382, %v9028
  %v9155 = vadd.f32 %v8387, %v9033
  %v9156 = vadd.f32 %v8392, %v9038
  %v9157 = vadd.f32 %v8397, %v9043
  %v9158 = vadd.f32 %v8402, %v9048
  %v9159 = vadd.f32 %v8407, %v9053
  %v9160 = vadd.f32 %v8412, %v9058
  %v9161 = vadd.f32 %v8417, %v9063
  %v9162 = vadd.f32 %v8422, %v9068
  %v9163 = vadd.f32 %v8427, %v9073
  %v9164 = vadd.f32 %v8432, %v9078
  %v9165 = vadd.f32 %v8437, %v9083
  %v9166 = vadd.f32 %v8442, %v9088
  %v9167 = vadd.f32 %v8447, %v9093
  %v9168 = vadd.f32 %v8452, %v9098
  %v9169 = vadd.f32 %v8457, %v9103
  %v9170 = vld [vmem:[%s105] sm:$0xff]
  %v9171 = vld [vmem:[%s105 + $0x8] sm:$0xff]
  %v9172 = vld [vmem:[%s105 + $0x18] sm:$0xff]
  %v9173 = vld [vmem:[%s105 + $0x20] sm:$0xff]
  %v9174 = vld [vmem:[%s105 + $0x30] sm:$0xff]
  %v9175 = vld [vmem:[%s105 + $0x38] sm:$0xff]
  %v9176 = vld [vmem:[%s105 + $0x48] sm:$0xff]
  %v9177 = vld [vmem:[%s105 + $0x50] sm:$0xff]
  %v9178 = vld [vmem:[%s105 + $0x60] sm:$0xff]
  %v9179 = vld [vmem:[%s105 + $0x68] sm:$0xff]
  %v9180 = vld [vmem:[%s105 + $0x78] sm:$0xff]
  %v9181 = vld [vmem:[%s105 + $0x80] sm:$0xff]
  %v9182 = vld [vmem:[%s105 + $0x90] sm:$0xff]
  %v9183 = vld [vmem:[%s105 + $0x98] sm:$0xff]
  %v9184 = vld [vmem:[%s105 + $0xa8] sm:$0xff]
  %v9185 = vld [vmem:[%s105 + $0xb0] sm:$0xff]
  %v9186 = vld [vmem:[%s105 + $0xc0] sm:$0xff]
  %v9187 = vld [vmem:[%s105 + $0xc8] sm:$0xff]
  %v9188 = vld [vmem:[%s105 + $0xd8] sm:$0xff]
  %v9189 = vld [vmem:[%s105 + $0xe0] sm:$0xff]
  %v9190 = vld [vmem:[%s105 + $0xf0] sm:$0xff]
  %v9191 = vld [vmem:[%s105 + $0xf8] sm:$0xff]
  %v9192 = vld [vmem:[%s105 + $0x108] sm:$0xff]
  %v9193 = vld [vmem:[%s105 + $0x110] sm:$0xff]
  %v9194 = vld [vmem:[%s105 + $0x120] sm:$0xff]
  %v9195 = vld [vmem:[%s105 + $0x128] sm:$0xff]
  %v9196 = vld [vmem:[%s105 + $0x138] sm:$0xff]
  %v9197 = vld [vmem:[%s105 + $0x140] sm:$0xff]
  %v9198 = vld [vmem:[%s105 + $0x150] sm:$0xff]
  %v9199 = vld [vmem:[%s105 + $0x158] sm:$0xff]
  %v9200 = vld [vmem:[%s105 + $0x168] sm:$0xff]
  %v9201 = vld [vmem:[%s105 + $0x170] sm:$0xff]
  %v9202 = vld [vmem:[%s105 + $0x1b0] sm:$0xff]
  %v9203 = vld [vmem:[%s105 + $0x1b8] sm:$0xff]
  %v9204 = vld [vmem:[%s105 + $0x1c8] sm:$0xff]
  %v9205 = vld [vmem:[%s105 + $0x1d0] sm:$0xff]
  %v9206 = vld [vmem:[%s105 + $0x1e0] sm:$0xff]
  %v9207 = vld [vmem:[%s105 + $0x1e8] sm:$0xff]
  %v9208 = vld [vmem:[%s105 + $0x1f8] sm:$0xff]
  %v9209 = vld [vmem:[%s105 + $0x200] sm:$0xff]
  %v9210 = vld [vmem:[%s105 + $0x210] sm:$0xff]
  %v9211 = vld [vmem:[%s105 + $0x218] sm:$0xff]
  %v9212 = vld [vmem:[%s105 + $0x228] sm:$0xff]
  %v9213 = vld [vmem:[%s105 + $0x230] sm:$0xff]
  %v9214 = vld [vmem:[%s105 + $0x240] sm:$0xff]
  %v9215 = vld [vmem:[%s105 + $0x248] sm:$0xff]
  %v9216 = vld [vmem:[%s105 + $0x258] sm:$0xff]
  %v9217 = vld [vmem:[%s105 + $0x260] sm:$0xff]
  %v9218 = vld [vmem:[%s105 + $0x270] sm:$0xff]
  %v9219 = vld [vmem:[%s105 + $0x278] sm:$0xff]
  %v9220 = vld [vmem:[%s105 + $0x288] sm:$0xff]
  %v9221 = vld [vmem:[%s105 + $0x290] sm:$0xff]
  %v9222 = vld [vmem:[%s105 + $0x2a0] sm:$0xff]
  %v9223 = vld [vmem:[%s105 + $0x2a8] sm:$0xff]
  %v9224 = vld [vmem:[%s105 + $0x2b8] sm:$0xff]
  %v9225 = vld [vmem:[%s105 + $0x2c0] sm:$0xff]
  %v9226 = vld [vmem:[%s105 + $0x2d0] sm:$0xff]
  %v9227 = vld [vmem:[%s105 + $0x2d8] sm:$0xff]
  %v9228 = vld [vmem:[%s105 + $0x2e8] sm:$0xff]
  %v9229 = vld [vmem:[%s105 + $0x2f0] sm:$0xff]
  %v9230 = vld [vmem:[%s105 + $0x300] sm:$0xff]
  %v9231 = vld [vmem:[%s105 + $0x308] sm:$0xff]
  %v9232 = vld [vmem:[%s105 + $0x318] sm:$0xff]
  %v9233 = vld [vmem:[%s105 + $0x320] sm:$0xff]
  %s9234 = scalar_lea.vmem %s2, 12
  %v9235 = vld [vmem:[%s9234] sm:$0xf]
  %v9237 = vsel %vm90, %v9170, 0
  %v9240 = vsel %vm90, %v9171, 0
  %v9243 = vsel %vm90, %v9172, 0
  %v9246 = vsel %vm90, %v9173, 0
  %v9249 = vsel %vm90, %v9174, 0
  %v9252 = vsel %vm90, %v9175, 0
  %v9255 = vsel %vm90, %v9176, 0
  %v9258 = vsel %vm90, %v9177, 0
  %v9261 = vsel %vm90, %v9178, 0
  %v9264 = vsel %vm90, %v9179, 0
  %v9267 = vsel %vm90, %v9180, 0
  %v9270 = vsel %vm90, %v9181, 0
  %v9273 = vsel %vm90, %v9182, 0
  %v9276 = vsel %vm90, %v9183, 0
  %v9279 = vsel %vm90, %v9184, 0
  %v9282 = vsel %vm90, %v9185, 0
  %v9285 = vsel %vm90, %v9186, 0
  %v9288 = vsel %vm90, %v9187, 0
  %v9291 = vsel %vm90, %v9188, 0
  %v9294 = vsel %vm90, %v9189, 0
  %v9297 = vsel %vm90, %v9190, 0
  %v9300 = vsel %vm90, %v9191, 0
  %v9303 = vsel %vm90, %v9192, 0
  %v9306 = vsel %vm90, %v9193, 0
  %v9309 = vsel %vm90, %v9194, 0
  %v9312 = vsel %vm90, %v9195, 0
  %v9315 = vsel %vm90, %v9196, 0
  %v9318 = vsel %vm90, %v9197, 0
  %v9321 = vsel %vm90, %v9198, 0
  %v9324 = vsel %vm90, %v9199, 0
  %v9327 = vsel %vm90, %v9200, 0
  %v9330 = vsel %vm90, %v9201, 0
  %v9333 = vsel %vm90, %v9202, 0
  %v9336 = vsel %vm90, %v9203, 0
  %v9339 = vsel %vm90, %v9204, 0
  %v9342 = vsel %vm90, %v9205, 0
  %v9345 = vsel %vm90, %v9206, 0
  %v9348 = vsel %vm90, %v9207, 0
  %v9351 = vsel %vm90, %v9208, 0
  %v9354 = vsel %vm90, %v9209, 0
  %v9357 = vsel %vm90, %v9210, 0
  %v9360 = vsel %vm90, %v9211, 0
  %v9363 = vsel %vm90, %v9212, 0
  %v9366 = vsel %vm90, %v9213, 0
  %v9369 = vsel %vm90, %v9214, 0
  %v9372 = vsel %vm90, %v9215, 0
  %v9375 = vsel %vm90, %v9216, 0
  %v9378 = vsel %vm90, %v9217, 0
  %v9381 = vsel %vm90, %v9218, 0
  %v9384 = vsel %vm90, %v9219, 0
  %v9387 = vsel %vm90, %v9220, 0
  %v9390 = vsel %vm90, %v9221, 0
  %v9393 = vsel %vm90, %v9222, 0
  %v9396 = vsel %vm90, %v9223, 0
  %v9399 = vsel %vm90, %v9224, 0
  %v9402 = vsel %vm90, %v9225, 0
  %v9405 = vsel %vm90, %v9226, 0
  %v9408 = vsel %vm90, %v9227, 0
  %v9411 = vsel %vm90, %v9228, 0
  %v9414 = vsel %vm90, %v9229, 0
  %v9417 = vsel %vm90, %v9230, 0
  %v9420 = vsel %vm90, %v9231, 0
  %v9423 = vsel %vm90, %v9232, 0
  %v9426 = vsel %vm90, %v9233, 0
  %v9429 = vsel %vm560, %v9235, 0
  %9431 = vmatprep.subr.mxu0 0.0
  %9432 = vmatpush1.msra.mxu0 %v9429
  %9433 = vmatprep.subr.mxu0 0.0
  %9434 = vmatpush1.msra.mxu0 0.0
  %9435 = vmatprep.subr.mxu0 0.0
  %9436 = vmatpush1.msra.mxu0 0.0
  %9437 = vmatprep.subr.mxu0 0.0
  %9438 = vmatpush1.msra.mxu0 0.0
  %9439 = vmatprep.subr.mxu0 0.0
  %9440 = vmatpush1.msra.mxu0 0.0
  %9441 = vmatprep.subr.mxu0 0.0
  %9442 = vmatpush1.msra.mxu0 0.0
  %9443 = vmatprep.subr.mxu0 0.0
  %9444 = vmatpush1.msra.mxu0 0.0
  %9445 = vmatprep.subr.mxu0 0.0
  %9446 = vmatpush1.msra.mxu0 0.0
  %9447 = vmatprep.subr.mxu0 0.0
  %9448 = vmatpush1.msra.mxu0 0.0
  %9449 = vmatprep.subr.mxu0 0.0
  %9450 = vmatpush1.msra.mxu0 0.0
  %9451 = vmatprep.subr.mxu0 0.0
  %9452 = vmatpush1.msra.mxu0 0.0
  %9453 = vmatprep.subr.mxu0 0.0
  %9454 = vmatpush1.msra.mxu0 0.0
  %9455 = vmatprep.subr.mxu0 0.0
  %9456 = vmatpush1.msra.mxu0 0.0
  %9457 = vmatprep.subr.mxu0 0.0
  %9458 = vmatpush1.msra.mxu0 0.0
  %9459 = vmatprep.subr.mxu0 0.0
  %9460 = vmatpush1.msra.mxu0 0.0
  %9461 = vmatprep.subr.mxu0 0.0
  %9462 = vmatpush1.msra.mxu0 0.0
  %9463 = vmatprep.subr.mxu0 0.0
  %9464 = vmatpush1.msra.mxu0 0.0
  %9465 = vmatprep.subr.mxu0 0.0
  %9466 = vmatpush1.msra.mxu0 0.0
  %9467 = vmatprep.subr.mxu0 0.0
  %9468 = vmatpush1.msra.mxu0 0.0
  %9469 = vmatprep.subr.mxu0 0.0
  %9470 = vmatpush1.msra.mxu0 0.0
  %9471 = vmatprep.subr.mxu0 0.0
  %9472 = vmatpush1.msra.mxu0 0.0
  %9473 = vmatprep.subr.mxu0 0.0
  %9474 = vmatpush1.msra.mxu0 0.0
  %9475 = vmatprep.subr.mxu0 0.0
  %9476 = vmatpush1.msra.mxu0 0.0
  %9477 = vmatprep.subr.mxu0 0.0
  %9478 = vmatpush1.msra.mxu0 0.0
  %9479 = vmatprep.subr.mxu0 0.0
  %9480 = vmatpush1.msra.mxu0 0.0
  %9481 = vmatprep.subr.mxu0 0.0
  %9482 = vmatpush1.msra.mxu0 0.0
  %9483 = vmatprep.subr.mxu0 0.0
  %9484 = vmatpush1.msra.mxu0 0.0
  %9485 = vmatprep.subr.mxu0 0.0
  %9486 = vmatpush1.msra.mxu0 0.0
  %9487 = vmatprep.subr.mxu0 0.0
  %9488 = vmatpush1.msra.mxu0 0.0
  %9489 = vmatprep.subr.mxu0 0.0
  %9490 = vmatpush1.msra.mxu0 0.0
  %9491 = vmatprep.subr.mxu0 0.0
  %9492 = vmatpush1.msra.mxu0 0.0
  %9493 = vmatprep.subr.mxu0 0.0
  %9494 = vmatpush1.msra.mxu0 0.0
  %9495 = vmatprep.mubr.f32.mxu0 0.0
  %9496 = vmatmul.mubr.f32.gmra.mrb[0].mxu0 %v9237
  %v9497 = vpop.f32.mrb[0].mxu0
  %v9498 = vadd.f32 0.0, %v9497
  %v9499 = vpop.f32.mrb[0].mxu0
  %9500 = vmatprep.mubr.f32.mxu0 0.0
  %9501 = vmatmul.mubr.f32.gmra.mrb[0].mxu0 %v9240
  %v9502 = vpop.f32.mrb[0].mxu0
  %v9503 = vadd.f32 0.0, %v9502
  %v9504 = vpop.f32.mrb[0].mxu0
  %9505 = vmatprep.mubr.f32.mxu0 0.0
  %9506 = vmatmul.mubr.f32.gmra.mrb[0].mxu0 %v9243
  %v9507 = vpop.f32.mrb[0].mxu0
  %v9508 = vadd.f32 0.0, %v9507
  %v9509 = vpop.f32.mrb[0].mxu0
  %9510 = vmatprep.mubr.f32.mxu0 0.0
  %9511 = vmatmul.mubr.f32.gmra.mrb[0].mxu0 %v9246
  %v9512 = vpop.f32.mrb[0].mxu0
  %v9513 = vadd.f32 0.0, %v9512
  %v9514 = vpop.f32.mrb[0].mxu0
  %9515 = vmatprep.mubr.f32.mxu0 0.0
  %9516 = vmatmul.mubr.f32.gmra.mrb[0].mxu0 %v9249
  %v9517 = vpop.f32.mrb[0].mxu0
  %v9518 = vadd.f32 0.0, %v9517
  %v9519 = vpop.f32.mrb[0].mxu0
  %9520 = vmatprep.mubr.f32.mxu0 0.0
  %9521 = vmatmul.mubr.f32.gmra.mrb[0].mxu0 %v9252
  %v9522 = vpop.f32.mrb[0].mxu0
  %v9523 = vadd.f32 0.0, %v9522
  %v9524 = vpop.f32.mrb[0].mxu0
  %9525 = vmatprep.mubr.f32.mxu0 0.0
  %9526 = vmatmul.mubr.f32.gmra.mrb[0].mxu0 %v9255
  %v9527 = vpop.f32.mrb[0].mxu0
  %v9528 = vadd.f32 0.0, %v9527
  %v9529 = vpop.f32.mrb[0].mxu0
  %9530 = vmatprep.mubr.f32.mxu0 0.0
  %9531 = vmatmul.mubr.f32.gmra.mrb[0].mxu0 %v9258
  %v9532 = vpop.f32.mrb[0].mxu0
  %v9533 = vadd.f32 0.0, %v9532
  %v9534 = vpop.f32.mrb[0].mxu0
  %9535 = vmatprep.mubr.f32.mxu0 0.0
  %9536 = vmatmul.mubr.f32.gmra.mrb[0].mxu0 %v9261
  %v9537 = vpop.f32.mrb[0].mxu0
  %v9538 = vadd.f32 0.0, %v9537
  %v9539 = vpop.f32.mrb[0].mxu0
  %9540 = vmatprep.mubr.f32.mxu0 0.0
  %9541 = vmatmul.mubr.f32.gmra.mrb[0].mxu0 %v9264
  %v9542 = vpop.f32.mrb[0].mxu0
  %v9543 = vadd.f32 0.0, %v9542
  %v9544 = vpop.f32.mrb[0].mxu0
  %9545 = vmatprep.mubr.f32.mxu0 0.0
  %9546 = vmatmul.mubr.f32.gmra.mrb[0].mxu0 %v9267
  %v9547 = vpop.f32.mrb[0].mxu0
  %v9548 = vadd.f32 0.0, %v9547
  %v9549 = vpop.f32.mrb[0].mxu0
  %9550 = vmatprep.mubr.f32.mxu0 0.0
  %9551 = vmatmul.mubr.f32.gmra.mrb[0].mxu0 %v9270
  %v9552 = vpop.f32.mrb[0].mxu0
  %v9553 = vadd.f32 0.0, %v9552
  %v9554 = vpop.f32.mrb[0].mxu0
  %9555 = vmatprep.mubr.f32.mxu0 0.0
  %9556 = vmatmul.mubr.f32.gmra.mrb[0].mxu0 %v9273
  %v9557 = vpop.f32.mrb[0].mxu0
  %v9558 = vadd.f32 0.0, %v9557
  %v9559 = vpop.f32.mrb[0].mxu0
  %9560 = vmatprep.mubr.f32.mxu0 0.0
  %9561 = vmatmul.mubr.f32.gmra.mrb[0].mxu0 %v9276
  %v9562 = vpop.f32.mrb[0].mxu0
  %v9563 = vadd.f32 0.0, %v9562
  %v9564 = vpop.f32.mrb[0].mxu0
  %9565 = vmatprep.mubr.f32.mxu0 0.0
  %9566 = vmatmul.mubr.f32.gmra.mrb[0].mxu0 %v9279
  %v9567 = vpop.f32.mrb[0].mxu0
  %v9568 = vadd.f32 0.0, %v9567
  %v9569 = vpop.f32.mrb[0].mxu0
  %9570 = vmatprep.mubr.f32.mxu0 0.0
  %9571 = vmatmul.mubr.f32.gmra.mrb[0].mxu0 %v9282
  %v9572 = vpop.f32.mrb[0].mxu0
  %v9573 = vadd.f32 0.0, %v9572
  %v9574 = vpop.f32.mrb[0].mxu0
  %9575 = vmatprep.mubr.f32.mxu0 0.0
  %9576 = vmatmul.mubr.f32.gmra.mrb[0].mxu0 %v9285
  %v9577 = vpop.f32.mrb[0].mxu0
  %v9578 = vadd.f32 0.0, %v9577
  %v9579 = vpop.f32.mrb[0].mxu0
  %9580 = vmatprep.mubr.f32.mxu0 0.0
  %9581 = vmatmul.mubr.f32.gmra.mrb[0].mxu0 %v9288
  %v9582 = vpop.f32.mrb[0].mxu0
  %v9583 = vadd.f32 0.0, %v9582
  %v9584 = vpop.f32.mrb[0].mxu0
  %9585 = vmatprep.mubr.f32.mxu0 0.0
  %9586 = vmatmul.mubr.f32.gmra.mrb[0].mxu0 %v9291
  %v9587 = vpop.f32.mrb[0].mxu0
  %v9588 = vadd.f32 0.0, %v9587
  %v9589 = vpop.f32.mrb[0].mxu0
  %9590 = vmatprep.mubr.f32.mxu0 0.0
  %9591 = vmatmul.mubr.f32.gmra.mrb[0].mxu0 %v9294
  %v9592 = vpop.f32.mrb[0].mxu0
  %v9593 = vadd.f32 0.0, %v9592
  %v9594 = vpop.f32.mrb[0].mxu0
  %9595 = vmatprep.mubr.f32.mxu0 0.0
  %9596 = vmatmul.mubr.f32.gmra.mrb[0].mxu0 %v9297
  %v9597 = vpop.f32.mrb[0].mxu0
  %v9598 = vadd.f32 0.0, %v9597
  %v9599 = vpop.f32.mrb[0].mxu0
  %9600 = vmatprep.mubr.f32.mxu0 0.0
  %9601 = vmatmul.mubr.f32.gmra.mrb[0].mxu0 %v9300
  %v9602 = vpop.f32.mrb[0].mxu0
  %v9603 = vadd.f32 0.0, %v9602
  %v9604 = vpop.f32.mrb[0].mxu0
  %9605 = vmatprep.mubr.f32.mxu0 0.0
  %9606 = vmatmul.mubr.f32.gmra.mrb[0].mxu0 %v9303
  %v9607 = vpop.f32.mrb[0].mxu0
  %v9608 = vadd.f32 0.0, %v9607
  %v9609 = vpop.f32.mrb[0].mxu0
  %9610 = vmatprep.mubr.f32.mxu0 0.0
  %9611 = vmatmul.mubr.f32.gmra.mrb[0].mxu0 %v9306
  %v9612 = vpop.f32.mrb[0].mxu0
  %v9613 = vadd.f32 0.0, %v9612
  %v9614 = vpop.f32.mrb[0].mxu0
  %9615 = vmatprep.mubr.f32.mxu0 0.0
  %9616 = vmatmul.mubr.f32.gmra.mrb[0].mxu0 %v9309
  %v9617 = vpop.f32.mrb[0].mxu0
  %v9618 = vadd.f32 0.0, %v9617
  %v9619 = vpop.f32.mrb[0].mxu0
  %9620 = vmatprep.mubr.f32.mxu0 0.0
  %9621 = vmatmul.mubr.f32.gmra.mrb[0].mxu0 %v9312
  %v9622 = vpop.f32.mrb[0].mxu0
  %v9623 = vadd.f32 0.0, %v9622
  %v9624 = vpop.f32.mrb[0].mxu0
  %9625 = vmatprep.mubr.f32.mxu0 0.0
  %9626 = vmatmul.mubr.f32.gmra.mrb[0].mxu0 %v9315
  %v9627 = vpop.f32.mrb[0].mxu0
  %v9628 = vadd.f32 0.0, %v9627
  %v9629 = vpop.f32.mrb[0].mxu0
  %9630 = vmatprep.mubr.f32.mxu0 0.0
  %9631 = vmatmul.mubr.f32.gmra.mrb[0].mxu0 %v9318
  %v9632 = vpop.f32.mrb[0].mxu0
  %v9633 = vadd.f32 0.0, %v9632
  %v9634 = vpop.f32.mrb[0].mxu0
  %9635 = vmatprep.mubr.f32.mxu0 0.0
  %9636 = vmatmul.mubr.f32.gmra.mrb[0].mxu0 %v9321
  %v9637 = vpop.f32.mrb[0].mxu0
  %v9638 = vadd.f32 0.0, %v9637
  %v9639 = vpop.f32.mrb[0].mxu0
  %9640 = vmatprep.mubr.f32.mxu0 0.0
  %9641 = vmatmul.mubr.f32.gmra.mrb[0].mxu0 %v9324
  %v9642 = vpop.f32.mrb[0].mxu0
  %v9643 = vadd.f32 0.0, %v9642
  %v9644 = vpop.f32.mrb[0].mxu0
  %9645 = vmatprep.mubr.f32.mxu0 0.0
  %9646 = vmatmul.mubr.f32.gmra.mrb[0].mxu0 %v9327
  %v9647 = vpop.f32.mrb[0].mxu0
  %v9648 = vadd.f32 0.0, %v9647
  %v9649 = vpop.f32.mrb[0].mxu0
  %9650 = vmatprep.mubr.f32.mxu0 0.0
  %9651 = vmatmul.mubr.f32.gmra.mrb[0].mxu0 %v9330
  %v9652 = vpop.f32.mrb[0].mxu0
  %v9653 = vadd.f32 0.0, %v9652
  %v9654 = vpop.f32.mrb[0].mxu0
  %9655 = vmatprep.mubr.f32.mxu0 0.0
  %9656 = vmatmul.mubr.f32.gmra.mrb[0].mxu0 %v9333
  %v9657 = vpop.f32.mrb[0].mxu0
  %v9658 = vadd.f32 0.0, %v9657
  %v9659 = vpop.f32.mrb[0].mxu0
  %9660 = vmatprep.mubr.f32.mxu0 0.0
  %9661 = vmatmul.mubr.f32.gmra.mrb[0].mxu0 %v9336
  %v9662 = vpop.f32.mrb[0].mxu0
  %v9663 = vadd.f32 0.0, %v9662
  %v9664 = vpop.f32.mrb[0].mxu0
  %9665 = vmatprep.mubr.f32.mxu0 0.0
  %9666 = vmatmul.mubr.f32.gmra.mrb[0].mxu0 %v9339
  %v9667 = vpop.f32.mrb[0].mxu0
  %v9668 = vadd.f32 0.0, %v9667
  %v9669 = vpop.f32.mrb[0].mxu0
  %9670 = vmatprep.mubr.f32.mxu0 0.0
  %9671 = vmatmul.mubr.f32.gmra.mrb[0].mxu0 %v9342
  %v9672 = vpop.f32.mrb[0].mxu0
  %v9673 = vadd.f32 0.0, %v9672
  %v9674 = vpop.f32.mrb[0].mxu0
  %9675 = vmatprep.mubr.f32.mxu0 0.0
  %9676 = vmatmul.mubr.f32.gmra.mrb[0].mxu0 %v9345
  %v9677 = vpop.f32.mrb[0].mxu0
  %v9678 = vadd.f32 0.0, %v9677
  %v9679 = vpop.f32.mrb[0].mxu0
  %9680 = vmatprep.mubr.f32.mxu0 0.0
  %9681 = vmatmul.mubr.f32.gmra.mrb[0].mxu0 %v9348
  %v9682 = vpop.f32.mrb[0].mxu0
  %v9683 = vadd.f32 0.0, %v9682
  %v9684 = vpop.f32.mrb[0].mxu0
  %9685 = vmatprep.mubr.f32.mxu0 0.0
  %9686 = vmatmul.mubr.f32.gmra.mrb[0].mxu0 %v9351
  %v9687 = vpop.f32.mrb[0].mxu0
  %v9688 = vadd.f32 0.0, %v9687
  %v9689 = vpop.f32.mrb[0].mxu0
  %9690 = vmatprep.mubr.f32.mxu0 0.0
  %9691 = vmatmul.mubr.f32.gmra.mrb[0].mxu0 %v9354
  %v9692 = vpop.f32.mrb[0].mxu0
  %v9693 = vadd.f32 0.0, %v9692
  %v9694 = vpop.f32.mrb[0].mxu0
  %9695 = vmatprep.mubr.f32.mxu0 0.0
  %9696 = vmatmul.mubr.f32.gmra.mrb[0].mxu0 %v9357
  %v9697 = vpop.f32.mrb[0].mxu0
  %v9698 = vadd.f32 0.0, %v9697
  %v9699 = vpop.f32.mrb[0].mxu0
  %9700 = vmatprep.mubr.f32.mxu0 0.0
  %9701 = vmatmul.mubr.f32.gmra.mrb[0].mxu0 %v9360
  %v9702 = vpop.f32.mrb[0].mxu0
  %v9703 = vadd.f32 0.0, %v9702
  %v9704 = vpop.f32.mrb[0].mxu0
  %9705 = vmatprep.mubr.f32.mxu0 0.0
  %9706 = vmatmul.mubr.f32.gmra.mrb[0].mxu0 %v9363
  %v9707 = vpop.f32.mrb[0].mxu0
  %v9708 = vadd.f32 0.0, %v9707
  %v9709 = vpop.f32.mrb[0].mxu0
  %9710 = vmatprep.mubr.f32.mxu0 0.0
  %9711 = vmatmul.mubr.f32.gmra.mrb[0].mxu0 %v9366
  %v9712 = vpop.f32.mrb[0].mxu0
  %v9713 = vadd.f32 0.0, %v9712
  %v9714 = vpop.f32.mrb[0].mxu0
  %9715 = vmatprep.mubr.f32.mxu0 0.0
  %9716 = vmatmul.mubr.f32.gmra.mrb[0].mxu0 %v9369
  %v9717 = vpop.f32.mrb[0].mxu0
  %v9718 = vadd.f32 0.0, %v9717
  %v9719 = vpop.f32.mrb[0].mxu0
  %9720 = vmatprep.mubr.f32.mxu0 0.0
  %9721 = vmatmul.mubr.f32.gmra.mrb[0].mxu0 %v9372
  %v9722 = vpop.f32.mrb[0].mxu0
  %v9723 = vadd.f32 0.0, %v9722
  %v9724 = vpop.f32.mrb[0].mxu0
  %9725 = vmatprep.mubr.f32.mxu0 0.0
  %9726 = vmatmul.mubr.f32.gmra.mrb[0].mxu0 %v9375
  %v9727 = vpop.f32.mrb[0].mxu0
  %v9728 = vadd.f32 0.0, %v9727
  %v9729 = vpop.f32.mrb[0].mxu0
  %9730 = vmatprep.mubr.f32.mxu0 0.0
  %9731 = vmatmul.mubr.f32.gmra.mrb[0].mxu0 %v9378
  %v9732 = vpop.f32.mrb[0].mxu0
  %v9733 = vadd.f32 0.0, %v9732
  %v9734 = vpop.f32.mrb[0].mxu0
  %9735 = vmatprep.mubr.f32.mxu0 0.0
  %9736 = vmatmul.mubr.f32.gmra.mrb[0].mxu0 %v9381
  %v9737 = vpop.f32.mrb[0].mxu0
  %v9738 = vadd.f32 0.0, %v9737
  %v9739 = vpop.f32.mrb[0].mxu0
  %9740 = vmatprep.mubr.f32.mxu0 0.0
  %9741 = vmatmul.mubr.f32.gmra.mrb[0].mxu0 %v9384
  %v9742 = vpop.f32.mrb[0].mxu0
  %v9743 = vadd.f32 0.0, %v9742
  %v9744 = vpop.f32.mrb[0].mxu0
  %9745 = vmatprep.mubr.f32.mxu0 0.0
  %9746 = vmatmul.mubr.f32.gmra.mrb[0].mxu0 %v9387
  %v9747 = vpop.f32.mrb[0].mxu0
  %v9748 = vadd.f32 0.0, %v9747
  %v9749 = vpop.f32.mrb[0].mxu0
  %9750 = vmatprep.mubr.f32.mxu0 0.0
  %9751 = vmatmul.mubr.f32.gmra.mrb[0].mxu0 %v9390
  %v9752 = vpop.f32.mrb[0].mxu0
  %v9753 = vadd.f32 0.0, %v9752
  %v9754 = vpop.f32.mrb[0].mxu0
  %9755 = vmatprep.mubr.f32.mxu0 0.0
  %9756 = vmatmul.mubr.f32.gmra.mrb[0].mxu0 %v9393
  %v9757 = vpop.f32.mrb[0].mxu0
  %v9758 = vadd.f32 0.0, %v9757
  %v9759 = vpop.f32.mrb[0].mxu0
  %9760 = vmatprep.mubr.f32.mxu0 0.0
  %9761 = vmatmul.mubr.f32.gmra.mrb[0].mxu0 %v9396
  %v9762 = vpop.f32.mrb[0].mxu0
  %v9763 = vadd.f32 0.0, %v9762
  %v9764 = vpop.f32.mrb[0].mxu0
  %9765 = vmatprep.mubr.f32.mxu0 0.0
  %9766 = vmatmul.mubr.f32.gmra.mrb[0].mxu0 %v9399
  %v9767 = vpop.f32.mrb[0].mxu0
  %v9768 = vadd.f32 0.0, %v9767
  %v9769 = vpop.f32.mrb[0].mxu0
  %9770 = vmatprep.mubr.f32.mxu0 0.0
  %9771 = vmatmul.mubr.f32.gmra.mrb[0].mxu0 %v9402
  %v9772 = vpop.f32.mrb[0].mxu0
  %v9773 = vadd.f32 0.0, %v9772
  %v9774 = vpop.f32.mrb[0].mxu0
  %9775 = vmatprep.mubr.f32.mxu0 0.0
  %9776 = vmatmul.mubr.f32.gmra.mrb[0].mxu0 %v9405
  %v9777 = vpop.f32.mrb[0].mxu0
  %v9778 = vadd.f32 0.0, %v9777
  %v9779 = vpop.f32.mrb[0].mxu0
  %9780 = vmatprep.mubr.f32.mxu0 0.0
  %9781 = vmatmul.mubr.f32.gmra.mrb[0].mxu0 %v9408
  %v9782 = vpop.f32.mrb[0].mxu0
  %v9783 = vadd.f32 0.0, %v9782
  %v9784 = vpop.f32.mrb[0].mxu0
  %9785 = vmatprep.mubr.f32.mxu0 0.0
  %9786 = vmatmul.mubr.f32.gmra.mrb[0].mxu0 %v9411
  %v9787 = vpop.f32.mrb[0].mxu0
  %v9788 = vadd.f32 0.0, %v9787
  %v9789 = vpop.f32.mrb[0].mxu0
  %9790 = vmatprep.mubr.f32.mxu0 0.0
  %9791 = vmatmul.mubr.f32.gmra.mrb[0].mxu0 %v9414
  %v9792 = vpop.f32.mrb[0].mxu0
  %v9793 = vadd.f32 0.0, %v9792
  %v9794 = vpop.f32.mrb[0].mxu0
  %9795 = vmatprep.mubr.f32.mxu0 0.0
  %9796 = vmatmul.mubr.f32.gmra.mrb[0].mxu0 %v9417
  %v9797 = vpop.f32.mrb[0].mxu0
  %v9798 = vadd.f32 0.0, %v9797
  %v9799 = vpop.f32.mrb[0].mxu0
  %9800 = vmatprep.mubr.f32.mxu0 0.0
  %9801 = vmatmul.mubr.f32.gmra.mrb[0].mxu0 %v9420
  %v9802 = vpop.f32.mrb[0].mxu0
  %v9803 = vadd.f32 0.0, %v9802
  %v9804 = vpop.f32.mrb[0].mxu0
  %9805 = vmatprep.mubr.f32.mxu0 0.0
  %9806 = vmatmul.mubr.f32.gmra.mrb[0].mxu0 %v9423
  %v9807 = vpop.f32.mrb[0].mxu0
  %v9808 = vadd.f32 0.0, %v9807
  %v9809 = vpop.f32.mrb[0].mxu0
  %9810 = vmatprep.mubr.f32.mxu0 0.0
  %9811 = vmatmul.mubr.f32.gmra.mrb[0].mxu0 %v9426
  %v9812 = vpop.f32.mrb[0].mxu0
  %v9813 = vadd.f32 0.0, %v9812
  %v9814 = vpop.f32.mrb[0].mxu0
  %9815 = vdwg.mxu0
  %v9816 = vadd.f32 %v9106, %v9498
  %v9817 = vadd.f32 %v9107, %v9503
  %v9818 = vadd.f32 %v9108, %v9508
  %v9819 = vadd.f32 %v9109, %v9513
  %v9820 = vadd.f32 %v9110, %v9518
  %v9821 = vadd.f32 %v9111, %v9523
  %v9822 = vadd.f32 %v9112, %v9528
  %v9823 = vadd.f32 %v9113, %v9533
  %v9824 = vadd.f32 %v9114, %v9538
  %v9825 = vadd.f32 %v9115, %v9543
  %v9826 = vadd.f32 %v9116, %v9548
  %v9827 = vadd.f32 %v9117, %v9553
  %v9828 = vadd.f32 %v9118, %v9558
  %v9829 = vadd.f32 %v9119, %v9563
  %v9830 = vadd.f32 %v9120, %v9568
  %v9831 = vadd.f32 %v9121, %v9573
  %v9832 = vadd.f32 %v9122, %v9578
  %v9833 = vadd.f32 %v9123, %v9583
  %v9834 = vadd.f32 %v9124, %v9588
  %v9835 = vadd.f32 %v9125, %v9593
  %v9836 = vadd.f32 %v9126, %v9598
  %v9837 = vadd.f32 %v9127, %v9603
  %v9838 = vadd.f32 %v9128, %v9608
  %v9839 = vadd.f32 %v9129, %v9613
  %v9840 = vadd.f32 %v9130, %v9618
  %v9841 = vadd.f32 %v9131, %v9623
  %v9842 = vadd.f32 %v9132, %v9628
  %v9843 = vadd.f32 %v9133, %v9633
  %v9844 = vadd.f32 %v9134, %v9638
  %v9845 = vadd.f32 %v9135, %v9643
  %v9846 = vadd.f32 %v9136, %v9648
  %v9847 = vadd.f32 %v9137, %v9653
  %v9848 = vadd.f32 %v9138, %v9658
  %v9849 = vadd.f32 %v9139, %v9663
  %v9850 = vadd.f32 %v9140, %v9668
  %v9851 = vadd.f32 %v9141, %v9673
  %v9852 = vadd.f32 %v9142, %v9678
  %v9853 = vadd.f32 %v9143, %v9683
  %v9854 = vadd.f32 %v9144, %v9688
  %v9855 = vadd.f32 %v9145, %v9693
  %v9856 = vadd.f32 %v9146, %v9698
  %v9857 = vadd.f32 %v9147, %v9703
  %v9858 = vadd.f32 %v9148, %v9708
  %v9859 = vadd.f32 %v9149, %v9713
  %v9860 = vadd.f32 %v9150, %v9718
  %v9861 = vadd.f32 %v9151, %v9723
  %v9862 = vadd.f32 %v9152, %v9728
  %v9863 = vadd.f32 %v9153, %v9733
  %v9864 = vadd.f32 %v9154, %v9738
  %v9865 = vadd.f32 %v9155, %v9743
  %v9866 = vadd.f32 %v9156, %v9748
  %v9867 = vadd.f32 %v9157, %v9753
  %v9868 = vadd.f32 %v9158, %v9758
  %v9869 = vadd.f32 %v9159, %v9763
  %v9870 = vadd.f32 %v9160, %v9768
  %v9871 = vadd.f32 %v9161, %v9773
  %v9872 = vadd.f32 %v9162, %v9778
  %v9873 = vadd.f32 %v9163, %v9783
  %v9874 = vadd.f32 %v9164, %v9788
  %v9875 = vadd.f32 %v9165, %v9793
  %v9876 = vadd.f32 %v9166, %v9798
  %v9877 = vadd.f32 %v9167, %v9803
  %v9878 = vadd.f32 %v9168, %v9808
  %v9879 = vadd.f32 %v9169, %v9813
  %v9880 = vld [vmem:[%s105 + $0x1] sm:$0xff]
  %v9881 = vld [vmem:[%s105 + $0x9] sm:$0xff]
  %v9882 = vld [vmem:[%s105 + $0x19] sm:$0xff]
  %v9883 = vld [vmem:[%s105 + $0x21] sm:$0xff]
  %v9884 = vld [vmem:[%s105 + $0x31] sm:$0xff]
  %v9885 = vld [vmem:[%s105 + $0x39] sm:$0xff]
  %v9886 = vld [vmem:[%s105 + $0x49] sm:$0xff]
  %v9887 = vld [vmem:[%s105 + $0x51] sm:$0xff]
  %v9888 = vld [vmem:[%s105 + $0x61] sm:$0xff]
  %v9889 = vld [vmem:[%s105 + $0x69] sm:$0xff]
  %v9890 = vld [vmem:[%s105 + $0x79] sm:$0xff]
  %v9891 = vld [vmem:[%s105 + $0x81] sm:$0xff]
  %v9892 = vld [vmem:[%s105 + $0x91] sm:$0xff]
  %v9893 = vld [vmem:[%s105 + $0x99] sm:$0xff]
  %v9894 = vld [vmem:[%s105 + $0xa9] sm:$0xff]
  %v9895 = vld [vmem:[%s105 + $0xb1] sm:$0xff]
  %v9896 = vld [vmem:[%s105 + $0xc1] sm:$0xff]
  %v9897 = vld [vmem:[%s105 + $0xc9] sm:$0xff]
  %v9898 = vld [vmem:[%s105 + $0xd9] sm:$0xff]
  %v9899 = vld [vmem:[%s105 + $0xe1] sm:$0xff]
  %v9900 = vld [vmem:[%s105 + $0xf1] sm:$0xff]
  %v9901 = vld [vmem:[%s105 + $0xf9] sm:$0xff]
  %v9902 = vld [vmem:[%s105 + $0x109] sm:$0xff]
  %v9903 = vld [vmem:[%s105 + $0x111] sm:$0xff]
  %v9904 = vld [vmem:[%s105 + $0x121] sm:$0xff]
  %v9905 = vld [vmem:[%s105 + $0x129] sm:$0xff]
  %v9906 = vld [vmem:[%s105 + $0x139] sm:$0xff]
  %v9907 = vld [vmem:[%s105 + $0x141] sm:$0xff]
  %v9908 = vld [vmem:[%s105 + $0x151] sm:$0xff]
  %v9909 = vld [vmem:[%s105 + $0x159] sm:$0xff]
  %v9910 = vld [vmem:[%s105 + $0x169] sm:$0xff]
  %v9911 = vld [vmem:[%s105 + $0x171] sm:$0xff]
  %v9912 = vld [vmem:[%s105 + $0x1b1] sm:$0xff]
  %v9913 = vld [vmem:[%s105 + $0x1b9] sm:$0xff]
  %v9914 = vld [vmem:[%s105 + $0x1c9] sm:$0xff]
  %v9915 = vld [vmem:[%s105 + $0x1d1] sm:$0xff]
  %v9916 = vld [vmem:[%s105 + $0x1e1] sm:$0xff]
  %v9917 = vld [vmem:[%s105 + $0x1e9] sm:$0xff]
  %v9918 = vld [vmem:[%s105 + $0x1f9] sm:$0xff]
  %v9919 = vld [vmem:[%s105 + $0x201] sm:$0xff]
  %v9920 = vld [vmem:[%s105 + $0x211] sm:$0xff]
  %v9921 = vld [vmem:[%s105 + $0x219] sm:$0xff]
  %v9922 = vld [vmem:[%s105 + $0x229] sm:$0xff]
  %v9923 = vld [vmem:[%s105 + $0x231] sm:$0xff]
  %v9924 = vld [vmem:[%s105 + $0x241] sm:$0xff]
  %v9925 = vld [vmem:[%s105 + $0x249] sm:$0xff]
  %v9926 = vld [vmem:[%s105 + $0x259] sm:$0xff]
  %v9927 = vld [vmem:[%s105 + $0x261] sm:$0xff]
  %v9928 = vld [vmem:[%s105 + $0x271] sm:$0xff]
  %v9929 = vld [vmem:[%s105 + $0x279] sm:$0xff]
  %v9930 = vld [vmem:[%s105 + $0x289] sm:$0xff]
  %v9931 = vld [vmem:[%s105 + $0x291] sm:$0xff]
  %v9932 = vld [vmem:[%s105 + $0x2a1] sm:$0xff]
  %v9933 = vld [vmem:[%s105 + $0x2a9] sm:$0xff]
  %v9934 = vld [vmem:[%s105 + $0x2b9] sm:$0xff]
  %v9935 = vld [vmem:[%s105 + $0x2c1] sm:$0xff]
  %v9936 = vld [vmem:[%s105 + $0x2d1] sm:$0xff]
  %v9937 = vld [vmem:[%s105 + $0x2d9] sm:$0xff]
  %v9938 = vld [vmem:[%s105 + $0x2e9] sm:$0xff]
  %v9939 = vld [vmem:[%s105 + $0x2f1] sm:$0xff]
  %v9940 = vld [vmem:[%s105 + $0x301] sm:$0xff]
  %v9941 = vld [vmem:[%s105 + $0x309] sm:$0xff]
  %v9942 = vld [vmem:[%s105 + $0x319] sm:$0xff]
  %v9943 = vld [vmem:[%s105 + $0x321] sm:$0xff]
  %s9944 = scalar_lea.vmem %s2, 16
  %v9945 = vld [vmem:[%s9944] sm:$0xf]
  %v9947 = vsel %vm90, %v9880, 0
  %v9950 = vsel %vm90, %v9881, 0
  %v9953 = vsel %vm90, %v9882, 0
  %v9956 = vsel %vm90, %v9883, 0
  %v9959 = vsel %vm90, %v9884, 0
  %v9962 = vsel %vm90, %v9885, 0
  %v9965 = vsel %vm90, %v9886, 0
  %v9968 = vsel %vm90, %v9887, 0
  %v9971 = vsel %vm90, %v9888, 0
  %v9974 = vsel %vm90, %v9889, 0
  %v9977 = vsel %vm90, %v9890, 0
  %v9980 = vsel %vm90, %v9891, 0
  %v9983 = vsel %vm90, %v9892, 0
  %v9986 = vsel %vm90, %v9893, 0
  %v9989 = vsel %vm90, %v9894, 0
  %v9992 = vsel %vm90, %v9895, 0
  %v9995 = vsel %vm90, %v9896, 0
  %v9998 = vsel %vm90, %v9897, 0
  %v10001 = vsel %vm90, %v9898, 0
  %v10004 = vsel %vm90, %v9899, 0
  %v10007 = vsel %vm90, %v9900, 0
  %v10010 = vsel %vm90, %v9901, 0
  %v10013 = vsel %vm90, %v9902, 0
  %v10016 = vsel %vm90, %v9903, 0
  %v10019 = vsel %vm90, %v9904, 0
  %v10022 = vsel %vm90, %v9905, 0
  %v10025 = vsel %vm90, %v9906, 0
  %v10028 = vsel %vm90, %v9907, 0
  %v10031 = vsel %vm90, %v9908, 0
  %v10034 = vsel %vm90, %v9909, 0
  %v10037 = vsel %vm90, %v9910, 0
  %v10040 = vsel %vm90, %v9911, 0
  %v10043 = vsel %vm90, %v9912, 0
  %v10046 = vsel %vm90, %v9913, 0
  %v10049 = vsel %vm90, %v9914, 0
  %v10052 = vsel %vm90, %v9915, 0
  %v10055 = vsel %vm90, %v9916, 0
  %v10058 = vsel %vm90, %v9917, 0
  %v10061 = vsel %vm90, %v9918, 0
  %v10064 = vsel %vm90, %v9919, 0
  %v10067 = vsel %vm90, %v9920, 0
  %v10070 = vsel %vm90, %v9921, 0
  %v10073 = vsel %vm90, %v9922, 0
  %v10076 = vsel %vm90, %v9923, 0
  %v10079 = vsel %vm90, %v9924, 0
  %v10082 = vsel %vm90, %v9925, 0
  %v10085 = vsel %vm90, %v9926, 0
  %v10088 = vsel %vm90, %v9927, 0
  %v10091 = vsel %vm90, %v9928, 0
  %v10094 = vsel %vm90, %v9929, 0
  %v10097 = vsel %vm90, %v9930, 0
  %v10100 = vsel %vm90, %v9931, 0
  %v10103 = vsel %vm90, %v9932, 0
  %v10106 = vsel %vm90, %v9933, 0
  %v10109 = vsel %vm90, %v9934, 0
  %v10112 = vsel %vm90, %v9935, 0
  %v10115 = vsel %vm90, %v9936, 0
  %v10118 = vsel %vm90, %v9937, 0
  %v10121 = vsel %vm90, %v9938, 0
  %v10124 = vsel %vm90, %v9939, 0
  %v10127 = vsel %vm90, %v9940, 0
  %v10130 = vsel %vm90, %v9941, 0
  %v10133 = vsel %vm90, %v9942, 0
  %v10136 = vsel %vm90, %v9943, 0
  %v10139 = vsel %vm560, %v9945, 0
  %10141 = vmatprep.subr.mxu0 0.0
  %10142 = vmatpush1.msra.mxu0 %v10139
  %10143 = vmatprep.subr.mxu0 0.0
  %10144 = vmatpush1.msra.mxu0 0.0
  %10145 = vmatprep.subr.mxu0 0.0
  %10146 = vmatpush1.msra.mxu0 0.0
  %10147 = vmatprep.subr.mxu0 0.0
  %10148 = vmatpush1.msra.mxu0 0.0
  %10149 = vmatprep.subr.mxu0 0.0
  %10150 = vmatpush1.msra.mxu0 0.0
  %10151 = vmatprep.subr.mxu0 0.0
  %10152 = vmatpush1.msra.mxu0 0.0
  %10153 = vmatprep.subr.mxu0 0.0
  %10154 = vmatpush1.msra.mxu0 0.0
  %10155 = vmatprep.subr.mxu0 0.0
  %10156 = vmatpush1.msra.mxu0 0.0
  %10157 = vmatprep.subr.mxu0 0.0
  %10158 = vmatpush1.msra.mxu0 0.0
  %10159 = vmatprep.subr.mxu0 0.0
  %10160 = vmatpush1.msra.mxu0 0.0
  %10161 = vmatprep.subr.mxu0 0.0
  %10162 = vmatpush1.msra.mxu0 0.0
  %10163 = vmatprep.subr.mxu0 0.0
  %10164 = vmatpush1.msra.mxu0 0.0
  %10165 = vmatprep.subr.mxu0 0.0
  %10166 = vmatpush1.msra.mxu0 0.0
  %10167 = vmatprep.subr.mxu0 0.0
  %10168 = vmatpush1.msra.mxu0 0.0
  %10169 = vmatprep.subr.mxu0 0.0
  %10170 = vmatpush1.msra.mxu0 0.0
  %10171 = vmatprep.subr.mxu0 0.0
  %10172 = vmatpush1.msra.mxu0 0.0
  %10173 = vmatprep.subr.mxu0 0.0
  %10174 = vmatpush1.msra.mxu0 0.0
  %10175 = vmatprep.subr.mxu0 0.0
  %10176 = vmatpush1.msra.mxu0 0.0
  %10177 = vmatprep.subr.mxu0 0.0
  %10178 = vmatpush1.msra.mxu0 0.0
  %10179 = vmatprep.subr.mxu0 0.0
  %10180 = vmatpush1.msra.mxu0 0.0
  %10181 = vmatprep.subr.mxu0 0.0
  %10182 = vmatpush1.msra.mxu0 0.0
  %10183 = vmatprep.subr.mxu0 0.0
  %10184 = vmatpush1.msra.mxu0 0.0
  %10185 = vmatprep.subr.mxu0 0.0
  %10186 = vmatpush1.msra.mxu0 0.0
  %10187 = vmatprep.subr.mxu0 0.0
  %10188 = vmatpush1.msra.mxu0 0.0
  %10189 = vmatprep.subr.mxu0 0.0
  %10190 = vmatpush1.msra.mxu0 0.0
  %10191 = vmatprep.subr.mxu0 0.0
  %10192 = vmatpush1.msra.mxu0 0.0
  %10193 = vmatprep.subr.mxu0 0.0
  %10194 = vmatpush1.msra.mxu0 0.0
  %10195 = vmatprep.subr.mxu0 0.0
  %10196 = vmatpush1.msra.mxu0 0.0
  %10197 = vmatprep.subr.mxu0 0.0
  %10198 = vmatpush1.msra.mxu0 0.0
  %10199 = vmatprep.subr.mxu0 0.0
  %10200 = vmatpush1.msra.mxu0 0.0
  %10201 = vmatprep.subr.mxu0 0.0
  %10202 = vmatpush1.msra.mxu0 0.0
  %10203 = vmatprep.subr.mxu0 0.0
  %10204 = vmatpush1.msra.mxu0 0.0
  %10205 = vmatprep.mubr.f32.mxu0 0.0
  %10206 = vmatmul.mubr.f32.gmra.mrb[0].mxu0 %v9947
  %v10207 = vpop.f32.mrb[0].mxu0
  %v10208 = vadd.f32 0.0, %v10207
  %v10209 = vpop.f32.mrb[0].mxu0
  %10210 = vmatprep.mubr.f32.mxu0 0.0
  %10211 = vmatmul.mubr.f32.gmra.mrb[0].mxu0 %v9950
  %v10212 = vpop.f32.mrb[0].mxu0
  %v10213 = vadd.f32 0.0, %v10212
  %v10214 = vpop.f32.mrb[0].mxu0
  %10215 = vmatprep.mubr.f32.mxu0 0.0
  %10216 = vmatmul.mubr.f32.gmra.mrb[0].mxu0 %v9953
  %v10217 = vpop.f32.mrb[0].mxu0
  %v10218 = vadd.f32 0.0, %v10217
  %v10219 = vpop.f32.mrb[0].mxu0
  %10220 = vmatprep.mubr.f32.mxu0 0.0
  %10221 = vmatmul.mubr.f32.gmra.mrb[0].mxu0 %v9956
  %v10222 = vpop.f32.mrb[0].mxu0
  %v10223 = vadd.f32 0.0, %v10222
  %v10224 = vpop.f32.mrb[0].mxu0
  %10225 = vmatprep.mubr.f32.mxu0 0.0
  %10226 = vmatmul.mubr.f32.gmra.mrb[0].mxu0 %v9959
  %v10227 = vpop.f32.mrb[0].mxu0
  %v10228 = vadd.f32 0.0, %v10227
  %v10229 = vpop.f32.mrb[0].mxu0
  %10230 = vmatprep.mubr.f32.mxu0 0.0
  %10231 = vmatmul.mubr.f32.gmra.mrb[0].mxu0 %v9962
  %v10232 = vpop.f32.mrb[0].mxu0
  %v10233 = vadd.f32 0.0, %v10232
  %v10234 = vpop.f32.mrb[0].mxu0
  %10235 = vmatprep.mubr.f32.mxu0 0.0
  %10236 = vmatmul.mubr.f32.gmra.mrb[0].mxu0 %v9965
  %v10237 = vpop.f32.mrb[0].mxu0
  %v10238 = vadd.f32 0.0, %v10237
  %v10239 = vpop.f32.mrb[0].mxu0
  %10240 = vmatprep.mubr.f32.mxu0 0.0
  %10241 = vmatmul.mubr.f32.gmra.mrb[0].mxu0 %v9968
  %v10242 = vpop.f32.mrb[0].mxu0
  %v10243 = vadd.f32 0.0, %v10242
  %v10244 = vpop.f32.mrb[0].mxu0
  %10245 = vmatprep.mubr.f32.mxu0 0.0
  %10246 = vmatmul.mubr.f32.gmra.mrb[0].mxu0 %v9971
  %v10247 = vpop.f32.mrb[0].mxu0
  %v10248 = vadd.f32 0.0, %v10247
  %v10249 = vpop.f32.mrb[0].mxu0
  %10250 = vmatprep.mubr.f32.mxu0 0.0
  %10251 = vmatmul.mubr.f32.gmra.mrb[0].mxu0 %v9974
  %v10252 = vpop.f32.mrb[0].mxu0
  %v10253 = vadd.f32 0.0, %v10252
  %v10254 = vpop.f32.mrb[0].mxu0
  %10255 = vmatprep.mubr.f32.mxu0 0.0
  %10256 = vmatmul.mubr.f32.gmra.mrb[0].mxu0 %v9977
  %v10257 = vpop.f32.mrb[0].mxu0
  %v10258 = vadd.f32 0.0, %v10257
  %v10259 = vpop.f32.mrb[0].mxu0
  %10260 = vmatprep.mubr.f32.mxu0 0.0
  %10261 = vmatmul.mubr.f32.gmra.mrb[0].mxu0 %v9980
  %v10262 = vpop.f32.mrb[0].mxu0
  %v10263 = vadd.f32 0.0, %v10262
  %v10264 = vpop.f32.mrb[0].mxu0
  %10265 = vmatprep.mubr.f32.mxu0 0.0
  %10266 = vmatmul.mubr.f32.gmra.mrb[0].mxu0 %v9983
  %v10267 = vpop.f32.mrb[0].mxu0
  %v10268 = vadd.f32 0.0, %v10267
  %v10269 = vpop.f32.mrb[0].mxu0
  %10270 = vmatprep.mubr.f32.mxu0 0.0
  %10271 = vmatmul.mubr.f32.gmra.mrb[0].mxu0 %v9986
  %v10272 = vpop.f32.mrb[0].mxu0
  %v10273 = vadd.f32 0.0, %v10272
  %v10274 = vpop.f32.mrb[0].mxu0
  %10275 = vmatprep.mubr.f32.mxu0 0.0
  %10276 = vmatmul.mubr.f32.gmra.mrb[0].mxu0 %v9989
  %v10277 = vpop.f32.mrb[0].mxu0
  %v10278 = vadd.f32 0.0, %v10277
  %v10279 = vpop.f32.mrb[0].mxu0
  %10280 = vmatprep.mubr.f32.mxu0 0.0
  %10281 = vmatmul.mubr.f32.gmra.mrb[0].mxu0 %v9992
  %v10282 = vpop.f32.mrb[0].mxu0
  %v10283 = vadd.f32 0.0, %v10282
  %v10284 = vpop.f32.mrb[0].mxu0
  %10285 = vmatprep.mubr.f32.mxu0 0.0
  %10286 = vmatmul.mubr.f32.gmra.mrb[0].mxu0 %v9995
  %v10287 = vpop.f32.mrb[0].mxu0
  %v10288 = vadd.f32 0.0, %v10287
  %v10289 = vpop.f32.mrb[0].mxu0
  %10290 = vmatprep.mubr.f32.mxu0 0.0
  %10291 = vmatmul.mubr.f32.gmra.mrb[0].mxu0 %v9998
  %v10292 = vpop.f32.mrb[0].mxu0
  %v10293 = vadd.f32 0.0, %v10292
  %v10294 = vpop.f32.mrb[0].mxu0
  %10295 = vmatprep.mubr.f32.mxu0 0.0
  %10296 = vmatmul.mubr.f32.gmra.mrb[0].mxu0 %v10001
  %v10297 = vpop.f32.mrb[0].mxu0
  %v10298 = vadd.f32 0.0, %v10297
  %v10299 = vpop.f32.mrb[0].mxu0
  %10300 = vmatprep.mubr.f32.mxu0 0.0
  %10301 = vmatmul.mubr.f32.gmra.mrb[0].mxu0 %v10004
  %v10302 = vpop.f32.mrb[0].mxu0
  %v10303 = vadd.f32 0.0, %v10302
  %v10304 = vpop.f32.mrb[0].mxu0
  %10305 = vmatprep.mubr.f32.mxu0 0.0
  %10306 = vmatmul.mubr.f32.gmra.mrb[0].mxu0 %v10007
  %v10307 = vpop.f32.mrb[0].mxu0
  %v10308 = vadd.f32 0.0, %v10307
  %v10309 = vpop.f32.mrb[0].mxu0
  %10310 = vmatprep.mubr.f32.mxu0 0.0
  %10311 = vmatmul.mubr.f32.gmra.mrb[0].mxu0 %v10010
  %v10312 = vpop.f32.mrb[0].mxu0
  %v10313 = vadd.f32 0.0, %v10312
  %v10314 = vpop.f32.mrb[0].mxu0
  %10315 = vmatprep.mubr.f32.mxu0 0.0
  %10316 = vmatmul.mubr.f32.gmra.mrb[0].mxu0 %v10013
  %v10317 = vpop.f32.mrb[0].mxu0
  %v10318 = vadd.f32 0.0, %v10317
  %v10319 = vpop.f32.mrb[0].mxu0
  %10320 = vmatprep.mubr.f32.mxu0 0.0
  %10321 = vmatmul.mubr.f32.gmra.mrb[0].mxu0 %v10016
  %v10322 = vpop.f32.mrb[0].mxu0
  %v10323 = vadd.f32 0.0, %v10322
  %v10324 = vpop.f32.mrb[0].mxu0
  %10325 = vmatprep.mubr.f32.mxu0 0.0
  %10326 = vmatmul.mubr.f32.gmra.mrb[0].mxu0 %v10019
  %v10327 = vpop.f32.mrb[0].mxu0
  %v10328 = vadd.f32 0.0, %v10327
  %v10329 = vpop.f32.mrb[0].mxu0
  %10330 = vmatprep.mubr.f32.mxu0 0.0
  %10331 = vmatmul.mubr.f32.gmra.mrb[0].mxu0 %v10022
  %v10332 = vpop.f32.mrb[0].mxu0
  %v10333 = vadd.f32 0.0, %v10332
  %v10334 = vpop.f32.mrb[0].mxu0
  %10335 = vmatprep.mubr.f32.mxu0 0.0
  %10336 = vmatmul.mubr.f32.gmra.mrb[0].mxu0 %v10025
  %v10337 = vpop.f32.mrb[0].mxu0
  %v10338 = vadd.f32 0.0, %v10337
  %v10339 = vpop.f32.mrb[0].mxu0
  %10340 = vmatprep.mubr.f32.mxu0 0.0
  %10341 = vmatmul.mubr.f32.gmra.mrb[0].mxu0 %v10028
  %v10342 = vpop.f32.mrb[0].mxu0
  %v10343 = vadd.f32 0.0, %v10342
  %v10344 = vpop.f32.mrb[0].mxu0
  %10345 = vmatprep.mubr.f32.mxu0 0.0
  %10346 = vmatmul.mubr.f32.gmra.mrb[0].mxu0 %v10031
  %v10347 = vpop.f32.mrb[0].mxu0
  %v10348 = vadd.f32 0.0, %v10347
  %v10349 = vpop.f32.mrb[0].mxu0
  %10350 = vmatprep.mubr.f32.mxu0 0.0
  %10351 = vmatmul.mubr.f32.gmra.mrb[0].mxu0 %v10034
  %v10352 = vpop.f32.mrb[0].mxu0
  %v10353 = vadd.f32 0.0, %v10352
  %v10354 = vpop.f32.mrb[0].mxu0
  %10355 = vmatprep.mubr.f32.mxu0 0.0
  %10356 = vmatmul.mubr.f32.gmra.mrb[0].mxu0 %v10037
  %v10357 = vpop.f32.mrb[0].mxu0
  %v10358 = vadd.f32 0.0, %v10357
  %v10359 = vpop.f32.mrb[0].mxu0
  %10360 = vmatprep.mubr.f32.mxu0 0.0
  %10361 = vmatmul.mubr.f32.gmra.mrb[0].mxu0 %v10040
  %v10362 = vpop.f32.mrb[0].mxu0
  %v10363 = vadd.f32 0.0, %v10362
  %v10364 = vpop.f32.mrb[0].mxu0
  %10365 = vmatprep.mubr.f32.mxu0 0.0
  %10366 = vmatmul.mubr.f32.gmra.mrb[0].mxu0 %v10043
  %v10367 = vpop.f32.mrb[0].mxu0
  %v10368 = vadd.f32 0.0, %v10367
  %v10369 = vpop.f32.mrb[0].mxu0
  %10370 = vmatprep.mubr.f32.mxu0 0.0
  %10371 = vmatmul.mubr.f32.gmra.mrb[0].mxu0 %v10046
  %v10372 = vpop.f32.mrb[0].mxu0
  %v10373 = vadd.f32 0.0, %v10372
  %v10374 = vpop.f32.mrb[0].mxu0
  %10375 = vmatprep.mubr.f32.mxu0 0.0
  %10376 = vmatmul.mubr.f32.gmra.mrb[0].mxu0 %v10049
  %v10377 = vpop.f32.mrb[0].mxu0
  %v10378 = vadd.f32 0.0, %v10377
  %v10379 = vpop.f32.mrb[0].mxu0
  %10380 = vmatprep.mubr.f32.mxu0 0.0
  %10381 = vmatmul.mubr.f32.gmra.mrb[0].mxu0 %v10052
  %v10382 = vpop.f32.mrb[0].mxu0
  %v10383 = vadd.f32 0.0, %v10382
  %v10384 = vpop.f32.mrb[0].mxu0
  %10385 = vmatprep.mubr.f32.mxu0 0.0
  %10386 = vmatmul.mubr.f32.gmra.mrb[0].mxu0 %v10055
  %v10387 = vpop.f32.mrb[0].mxu0
  %v10388 = vadd.f32 0.0, %v10387
  %v10389 = vpop.f32.mrb[0].mxu0
  %10390 = vmatprep.mubr.f32.mxu0 0.0
  %10391 = vmatmul.mubr.f32.gmra.mrb[0].mxu0 %v10058
  %v10392 = vpop.f32.mrb[0].mxu0
  %v10393 = vadd.f32 0.0, %v10392
  %v10394 = vpop.f32.mrb[0].mxu0
  %10395 = vmatprep.mubr.f32.mxu0 0.0
  %10396 = vmatmul.mubr.f32.gmra.mrb[0].mxu0 %v10061
  %v10397 = vpop.f32.mrb[0].mxu0
  %v10398 = vadd.f32 0.0, %v10397
  %v10399 = vpop.f32.mrb[0].mxu0
  %10400 = vmatprep.mubr.f32.mxu0 0.0
  %10401 = vmatmul.mubr.f32.gmra.mrb[0].mxu0 %v10064
  %v10402 = vpop.f32.mrb[0].mxu0
  %v10403 = vadd.f32 0.0, %v10402
  %v10404 = vpop.f32.mrb[0].mxu0
  %10405 = vmatprep.mubr.f32.mxu0 0.0
  %10406 = vmatmul.mubr.f32.gmra.mrb[0].mxu0 %v10067
  %v10407 = vpop.f32.mrb[0].mxu0
  %v10408 = vadd.f32 0.0, %v10407
  %v10409 = vpop.f32.mrb[0].mxu0
  %10410 = vmatprep.mubr.f32.mxu0 0.0
  %10411 = vmatmul.mubr.f32.gmra.mrb[0].mxu0 %v10070
  %v10412 = vpop.f32.mrb[0].mxu0
  %v10413 = vadd.f32 0.0, %v10412
  %v10414 = vpop.f32.mrb[0].mxu0
  %10415 = vmatprep.mubr.f32.mxu0 0.0
  %10416 = vmatmul.mubr.f32.gmra.mrb[0].mxu0 %v10073
  %v10417 = vpop.f32.mrb[0].mxu0
  %v10418 = vadd.f32 0.0, %v10417
  %v10419 = vpop.f32.mrb[0].mxu0
  %10420 = vmatprep.mubr.f32.mxu0 0.0
  %10421 = vmatmul.mubr.f32.gmra.mrb[0].mxu0 %v10076
  %v10422 = vpop.f32.mrb[0].mxu0
  %v10423 = vadd.f32 0.0, %v10422
  %v10424 = vpop.f32.mrb[0].mxu0
  %10425 = vmatprep.mubr.f32.mxu0 0.0
  %10426 = vmatmul.mubr.f32.gmra.mrb[0].mxu0 %v10079
  %v10427 = vpop.f32.mrb[0].mxu0
  %v10428 = vadd.f32 0.0, %v10427
  %v10429 = vpop.f32.mrb[0].mxu0
  %10430 = vmatprep.mubr.f32.mxu0 0.0
  %10431 = vmatmul.mubr.f32.gmra.mrb[0].mxu0 %v10082
  %v10432 = vpop.f32.mrb[0].mxu0
  %v10433 = vadd.f32 0.0, %v10432
  %v10434 = vpop.f32.mrb[0].mxu0
  %10435 = vmatprep.mubr.f32.mxu0 0.0
  %10436 = vmatmul.mubr.f32.gmra.mrb[0].mxu0 %v10085
  %v10437 = vpop.f32.mrb[0].mxu0
  %v10438 = vadd.f32 0.0, %v10437
  %v10439 = vpop.f32.mrb[0].mxu0
  %10440 = vmatprep.mubr.f32.mxu0 0.0
  %10441 = vmatmul.mubr.f32.gmra.mrb[0].mxu0 %v10088
  %v10442 = vpop.f32.mrb[0].mxu0
  %v10443 = vadd.f32 0.0, %v10442
  %v10444 = vpop.f32.mrb[0].mxu0
  %10445 = vmatprep.mubr.f32.mxu0 0.0
  %10446 = vmatmul.mubr.f32.gmra.mrb[0].mxu0 %v10091
  %v10447 = vpop.f32.mrb[0].mxu0
  %v10448 = vadd.f32 0.0, %v10447
  %v10449 = vpop.f32.mrb[0].mxu0
  %10450 = vmatprep.mubr.f32.mxu0 0.0
  %10451 = vmatmul.mubr.f32.gmra.mrb[0].mxu0 %v10094
  %v10452 = vpop.f32.mrb[0].mxu0
  %v10453 = vadd.f32 0.0, %v10452
  %v10454 = vpop.f32.mrb[0].mxu0
  %10455 = vmatprep.mubr.f32.mxu0 0.0
  %10456 = vmatmul.mubr.f32.gmra.mrb[0].mxu0 %v10097
  %v10457 = vpop.f32.mrb[0].mxu0
  %v10458 = vadd.f32 0.0, %v10457
  %v10459 = vpop.f32.mrb[0].mxu0
  %10460 = vmatprep.mubr.f32.mxu0 0.0
  %10461 = vmatmul.mubr.f32.gmra.mrb[0].mxu0 %v10100
  %v10462 = vpop.f32.mrb[0].mxu0
  %v10463 = vadd.f32 0.0, %v10462
  %v10464 = vpop.f32.mrb[0].mxu0
  %10465 = vmatprep.mubr.f32.mxu0 0.0
  %10466 = vmatmul.mubr.f32.gmra.mrb[0].mxu0 %v10103
  %v10467 = vpop.f32.mrb[0].mxu0
  %v10468 = vadd.f32 0.0, %v10467
  %v10469 = vpop.f32.mrb[0].mxu0
  %10470 = vmatprep.mubr.f32.mxu0 0.0
  %10471 = vmatmul.mubr.f32.gmra.mrb[0].mxu0 %v10106
  %v10472 = vpop.f32.mrb[0].mxu0
  %v10473 = vadd.f32 0.0, %v10472
  %v10474 = vpop.f32.mrb[0].mxu0
  %10475 = vmatprep.mubr.f32.mxu0 0.0
  %10476 = vmatmul.mubr.f32.gmra.mrb[0].mxu0 %v10109
  %v10477 = vpop.f32.mrb[0].mxu0
  %v10478 = vadd.f32 0.0, %v10477
  %v10479 = vpop.f32.mrb[0].mxu0
  %10480 = vmatprep.mubr.f32.mxu0 0.0
  %10481 = vmatmul.mubr.f32.gmra.mrb[0].mxu0 %v10112
  %v10482 = vpop.f32.mrb[0].mxu0
  %v10483 = vadd.f32 0.0, %v10482
  %v10484 = vpop.f32.mrb[0].mxu0
  %10485 = vmatprep.mubr.f32.mxu0 0.0
  %10486 = vmatmul.mubr.f32.gmra.mrb[0].mxu0 %v10115
  %v10487 = vpop.f32.mrb[0].mxu0
  %v10488 = vadd.f32 0.0, %v10487
  %v10489 = vpop.f32.mrb[0].mxu0
  %10490 = vmatprep.mubr.f32.mxu0 0.0
  %10491 = vmatmul.mubr.f32.gmra.mrb[0].mxu0 %v10118
  %v10492 = vpop.f32.mrb[0].mxu0
  %v10493 = vadd.f32 0.0, %v10492
  %v10494 = vpop.f32.mrb[0].mxu0
  %10495 = vmatprep.mubr.f32.mxu0 0.0
  %10496 = vmatmul.mubr.f32.gmra.mrb[0].mxu0 %v10121
  %v10497 = vpop.f32.mrb[0].mxu0
  %v10498 = vadd.f32 0.0, %v10497
  %v10499 = vpop.f32.mrb[0].mxu0
  %10500 = vmatprep.mubr.f32.mxu0 0.0
  %10501 = vmatmul.mubr.f32.gmra.mrb[0].mxu0 %v10124
  %v10502 = vpop.f32.mrb[0].mxu0
  %v10503 = vadd.f32 0.0, %v10502
  %v10504 = vpop.f32.mrb[0].mxu0
  %10505 = vmatprep.mubr.f32.mxu0 0.0
  %10506 = vmatmul.mubr.f32.gmra.mrb[0].mxu0 %v10127
  %v10507 = vpop.f32.mrb[0].mxu0
  %v10508 = vadd.f32 0.0, %v10507
  %v10509 = vpop.f32.mrb[0].mxu0
  %10510 = vmatprep.mubr.f32.mxu0 0.0
  %10511 = vmatmul.mubr.f32.gmra.mrb[0].mxu0 %v10130
  %v10512 = vpop.f32.mrb[0].mxu0
  %v10513 = vadd.f32 0.0, %v10512
  %v10514 = vpop.f32.mrb[0].mxu0
  %10515 = vmatprep.mubr.f32.mxu0 0.0
  %10516 = vmatmul.mubr.f32.gmra.mrb[0].mxu0 %v10133
  %v10517 = vpop.f32.mrb[0].mxu0
  %v10518 = vadd.f32 0.0, %v10517
  %v10519 = vpop.f32.mrb[0].mxu0
  %10520 = vmatprep.mubr.f32.mxu0 0.0
  %10521 = vmatmul.mubr.f32.gmra.mrb[0].mxu0 %v10136
  %v10522 = vpop.f32.mrb[0].mxu0
  %v10523 = vadd.f32 0.0, %v10522
  %v10524 = vpop.f32.mrb[0].mxu0
  %10525 = vdwg.mxu0
  %v10526 = vadd.f32 %v9816, %v10208
  %v10527 = vadd.f32 %v9817, %v10213
  %v10528 = vadd.f32 %v9818, %v10218
  %v10529 = vadd.f32 %v9819, %v10223
  %v10530 = vadd.f32 %v9820, %v10228
  %v10531 = vadd.f32 %v9821, %v10233
  %v10532 = vadd.f32 %v9822, %v10238
  %v10533 = vadd.f32 %v9823, %v10243
  %v10534 = vadd.f32 %v9824, %v10248
  %v10535 = vadd.f32 %v9825, %v10253
  %v10536 = vadd.f32 %v9826, %v10258
  %v10537 = vadd.f32 %v9827, %v10263
  %v10538 = vadd.f32 %v9828, %v10268
  %v10539 = vadd.f32 %v9829, %v10273
  %v10540 = vadd.f32 %v9830, %v10278
  %v10541 = vadd.f32 %v9831, %v10283
  %v10542 = vadd.f32 %v9832, %v10288
  %v10543 = vadd.f32 %v9833, %v10293
  %v10544 = vadd.f32 %v9834, %v10298
  %v10545 = vadd.f32 %v9835, %v10303
  %v10546 = vadd.f32 %v9836, %v10308
  %v10547 = vadd.f32 %v9837, %v10313
  %v10548 = vadd.f32 %v9838, %v10318
  %v10549 = vadd.f32 %v9839, %v10323
  %v10550 = vadd.f32 %v9840, %v10328
  %v10551 = vadd.f32 %v9841, %v10333
  %v10552 = vadd.f32 %v9842, %v10338
  %v10553 = vadd.f32 %v9843, %v10343
  %v10554 = vadd.f32 %v9844, %v10348
  %v10555 = vadd.f32 %v9845, %v10353
  %v10556 = vadd.f32 %v9846, %v10358
  %v10557 = vadd.f32 %v9847, %v10363
  %v10558 = vadd.f32 %v9848, %v10368
  %v10559 = vadd.f32 %v9849, %v10373
  %v10560 = vadd.f32 %v9850, %v10378
  %v10561 = vadd.f32 %v9851, %v10383
  %v10562 = vadd.f32 %v9852, %v10388
  %v10563 = vadd.f32 %v9853, %v10393
  %v10564 = vadd.f32 %v9854, %v10398
  %v10565 = vadd.f32 %v9855, %v10403
  %v10566 = vadd.f32 %v9856, %v10408
  %v10567 = vadd.f32 %v9857, %v10413
  %v10568 = vadd.f32 %v9858, %v10418
  %v10569 = vadd.f32 %v9859, %v10423
  %v10570 = vadd.f32 %v9860, %v10428
  %v10571 = vadd.f32 %v9861, %v10433
  %v10572 = vadd.f32 %v9862, %v10438
  %v10573 = vadd.f32 %v9863, %v10443
  %v10574 = vadd.f32 %v9864, %v10448
  %v10575 = vadd.f32 %v9865, %v10453
  %v10576 = vadd.f32 %v9866, %v10458
  %v10577 = vadd.f32 %v9867, %v10463
  %v10578 = vadd.f32 %v9868, %v10468
  %v10579 = vadd.f32 %v9869, %v10473
  %v10580 = vadd.f32 %v9870, %v10478
  %v10581 = vadd.f32 %v9871, %v10483
  %v10582 = vadd.f32 %v9872, %v10488
  %v10583 = vadd.f32 %v9873, %v10493
  %v10584 = vadd.f32 %v9874, %v10498
  %v10585 = vadd.f32 %v9875, %v10503
  %v10586 = vadd.f32 %v9876, %v10508
  %v10587 = vadd.f32 %v9877, %v10513
  %v10588 = vadd.f32 %v9878, %v10518
  %v10589 = vadd.f32 %v9879, %v10523
  %v10590 = vld [vmem:[%s105 + $0x2] sm:$0xff]
  %v10591 = vld [vmem:[%s105 + $0xa] sm:$0xff]
  %v10592 = vld [vmem:[%s105 + $0x1a] sm:$0xff]
  %v10593 = vld [vmem:[%s105 + $0x22] sm:$0xff]
  %v10594 = vld [vmem:[%s105 + $0x32] sm:$0xff]
  %v10595 = vld [vmem:[%s105 + $0x3a] sm:$0xff]
  %v10596 = vld [vmem:[%s105 + $0x4a] sm:$0xff]
  %v10597 = vld [vmem:[%s105 + $0x52] sm:$0xff]
  %v10598 = vld [vmem:[%s105 + $0x62] sm:$0xff]
  %v10599 = vld [vmem:[%s105 + $0x6a] sm:$0xff]
  %v10600 = vld [vmem:[%s105 + $0x7a] sm:$0xff]
  %v10601 = vld [vmem:[%s105 + $0x82] sm:$0xff]
  %v10602 = vld [vmem:[%s105 + $0x92] sm:$0xff]
  %v10603 = vld [vmem:[%s105 + $0x9a] sm:$0xff]
  %v10604 = vld [vmem:[%s105 + $0xaa] sm:$0xff]
  %v10605 = vld [vmem:[%s105 + $0xb2] sm:$0xff]
  %v10606 = vld [vmem:[%s105 + $0xc2] sm:$0xff]
  %v10607 = vld [vmem:[%s105 + $0xca] sm:$0xff]
  %v10608 = vld [vmem:[%s105 + $0xda] sm:$0xff]
  %v10609 = vld [vmem:[%s105 + $0xe2] sm:$0xff]
  %v10610 = vld [vmem:[%s105 + $0xf2] sm:$0xff]
  %v10611 = vld [vmem:[%s105 + $0xfa] sm:$0xff]
  %v10612 = vld [vmem:[%s105 + $0x10a] sm:$0xff]
  %v10613 = vld [vmem:[%s105 + $0x112] sm:$0xff]
  %v10614 = vld [vmem:[%s105 + $0x122] sm:$0xff]
  %v10615 = vld [vmem:[%s105 + $0x12a] sm:$0xff]
  %v10616 = vld [vmem:[%s105 + $0x13a] sm:$0xff]
  %v10617 = vld [vmem:[%s105 + $0x142] sm:$0xff]
  %v10618 = vld [vmem:[%s105 + $0x152] sm:$0xff]
  %v10619 = vld [vmem:[%s105 + $0x15a] sm:$0xff]
  %v10620 = vld [vmem:[%s105 + $0x16a] sm:$0xff]
  %v10621 = vld [vmem:[%s105 + $0x172] sm:$0xff]
  %v10622 = vld [vmem:[%s105 + $0x1b2] sm:$0xff]
  %v10623 = vld [vmem:[%s105 + $0x1ba] sm:$0xff]
  %v10624 = vld [vmem:[%s105 + $0x1ca] sm:$0xff]
  %v10625 = vld [vmem:[%s105 + $0x1d2] sm:$0xff]
  %v10626 = vld [vmem:[%s105 + $0x1e2] sm:$0xff]
  %v10627 = vld [vmem:[%s105 + $0x1ea] sm:$0xff]
  %v10628 = vld [vmem:[%s105 + $0x1fa] sm:$0xff]
  %v10629 = vld [vmem:[%s105 + $0x202] sm:$0xff]
  %v10630 = vld [vmem:[%s105 + $0x212] sm:$0xff]
  %v10631 = vld [vmem:[%s105 + $0x21a] sm:$0xff]
  %v10632 = vld [vmem:[%s105 + $0x22a] sm:$0xff]
  %v10633 = vld [vmem:[%s105 + $0x232] sm:$0xff]
  %v10634 = vld [vmem:[%s105 + $0x242] sm:$0xff]
  %v10635 = vld [vmem:[%s105 + $0x24a] sm:$0xff]
  %v10636 = vld [vmem:[%s105 + $0x25a] sm:$0xff]
  %v10637 = vld [vmem:[%s105 + $0x262] sm:$0xff]
  %v10638 = vld [vmem:[%s105 + $0x272] sm:$0xff]
  %v10639 = vld [vmem:[%s105 + $0x27a] sm:$0xff]
  %v10640 = vld [vmem:[%s105 + $0x28a] sm:$0xff]
  %v10641 = vld [vmem:[%s105 + $0x292] sm:$0xff]
  %v10642 = vld [vmem:[%s105 + $0x2a2] sm:$0xff]
  %v10643 = vld [vmem:[%s105 + $0x2aa] sm:$0xff]
  %v10644 = vld [vmem:[%s105 + $0x2ba] sm:$0xff]
  %v10645 = vld [vmem:[%s105 + $0x2c2] sm:$0xff]
  %v10646 = vld [vmem:[%s105 + $0x2d2] sm:$0xff]
  %v10647 = vld [vmem:[%s105 + $0x2da] sm:$0xff]
  %v10648 = vld [vmem:[%s105 + $0x2ea] sm:$0xff]
  %v10649 = vld [vmem:[%s105 + $0x2f2] sm:$0xff]
  %v10650 = vld [vmem:[%s105 + $0x302] sm:$0xff]
  %v10651 = vld [vmem:[%s105 + $0x30a] sm:$0xff]
  %v10652 = vld [vmem:[%s105 + $0x31a] sm:$0xff]
  %v10653 = vld [vmem:[%s105 + $0x322] sm:$0xff]
  %s10654 = scalar_lea.vmem %s2, 20
  %v10655 = vld [vmem:[%s10654] sm:$0xf]
  %v10657 = vsel %vm90, %v10590, 0
  %v10660 = vsel %vm90, %v10591, 0
  %v10663 = vsel %vm90, %v10592, 0
  %v10666 = vsel %vm90, %v10593, 0
  %v10669 = vsel %vm90, %v10594, 0
  %v10672 = vsel %vm90, %v10595, 0
  %v10675 = vsel %vm90, %v10596, 0
  %v10678 = vsel %vm90, %v10597, 0
  %v10681 = vsel %vm90, %v10598, 0
  %v10684 = vsel %vm90, %v10599, 0
  %v10687 = vsel %vm90, %v10600, 0
  %v10690 = vsel %vm90, %v10601, 0
  %v10693 = vsel %vm90, %v10602, 0
  %v10696 = vsel %vm90, %v10603, 0
  %v10699 = vsel %vm90, %v10604, 0
  %v10702 = vsel %vm90, %v10605, 0
  %v10705 = vsel %vm90, %v10606, 0
  %v10708 = vsel %vm90, %v10607, 0
  %v10711 = vsel %vm90, %v10608, 0
  %v10714 = vsel %vm90, %v10609, 0
  %v10717 = vsel %vm90, %v10610, 0
  %v10720 = vsel %vm90, %v10611, 0
  %v10723 = vsel %vm90, %v10612, 0
  %v10726 = vsel %vm90, %v10613, 0
  %v10729 = vsel %vm90, %v10614, 0
  %v10732 = vsel %vm90, %v10615, 0
  %v10735 = vsel %vm90, %v10616, 0
  %v10738 = vsel %vm90, %v10617, 0
  %v10741 = vsel %vm90, %v10618, 0
  %v10744 = vsel %vm90, %v10619, 0
  %v10747 = vsel %vm90, %v10620, 0
  %v10750 = vsel %vm90, %v10621, 0
  %v10753 = vsel %vm90, %v10622, 0
  %v10756 = vsel %vm90, %v10623, 0
  %v10759 = vsel %vm90, %v10624, 0
  %v10762 = vsel %vm90, %v10625, 0
  %v10765 = vsel %vm90, %v10626, 0
  %v10768 = vsel %vm90, %v10627, 0
  %v10771 = vsel %vm90, %v10628, 0
  %v10774 = vsel %vm90, %v10629, 0
  %v10777 = vsel %vm90, %v10630, 0
  %v10780 = vsel %vm90, %v10631, 0
  %v10783 = vsel %vm90, %v10632, 0
  %v10786 = vsel %vm90, %v10633, 0
  %v10789 = vsel %vm90, %v10634, 0
  %v10792 = vsel %vm90, %v10635, 0
  %v10795 = vsel %vm90, %v10636, 0
  %v10798 = vsel %vm90, %v10637, 0
  %v10801 = vsel %vm90, %v10638, 0
  %v10804 = vsel %vm90, %v10639, 0
  %v10807 = vsel %vm90, %v10640, 0
  %v10810 = vsel %vm90, %v10641, 0
  %v10813 = vsel %vm90, %v10642, 0
  %v10816 = vsel %vm90, %v10643, 0
  %v10819 = vsel %vm90, %v10644, 0
  %v10822 = vsel %vm90, %v10645, 0
  %v10825 = vsel %vm90, %v10646, 0
  %v10828 = vsel %vm90, %v10647, 0
  %v10831 = vsel %vm90, %v10648, 0
  %v10834 = vsel %vm90, %v10649, 0
  %v10837 = vsel %vm90, %v10650, 0
  %v10840 = vsel %vm90, %v10651, 0
  %v10843 = vsel %vm90, %v10652, 0
  %v10846 = vsel %vm90, %v10653, 0
  %v10849 = vsel %vm560, %v10655, 0
  %10851 = vmatprep.subr.mxu0 0.0
  %10852 = vmatpush1.msra.mxu0 %v10849
  %10853 = vmatprep.subr.mxu0 0.0
  %10854 = vmatpush1.msra.mxu0 0.0
  %10855 = vmatprep.subr.mxu0 0.0
  %10856 = vmatpush1.msra.mxu0 0.0
  %10857 = vmatprep.subr.mxu0 0.0
  %10858 = vmatpush1.msra.mxu0 0.0
  %10859 = vmatprep.subr.mxu0 0.0
  %10860 = vmatpush1.msra.mxu0 0.0
  %10861 = vmatprep.subr.mxu0 0.0
  %10862 = vmatpush1.msra.mxu0 0.0
  %10863 = vmatprep.subr.mxu0 0.0
  %10864 = vmatpush1.msra.mxu0 0.0
  %10865 = vmatprep.subr.mxu0 0.0
  %10866 = vmatpush1.msra.mxu0 0.0
  %10867 = vmatprep.subr.mxu0 0.0
  %10868 = vmatpush1.msra.mxu0 0.0
  %10869 = vmatprep.subr.mxu0 0.0
  %10870 = vmatpush1.msra.mxu0 0.0
  %10871 = vmatprep.subr.mxu0 0.0
  %10872 = vmatpush1.msra.mxu0 0.0
  %10873 = vmatprep.subr.mxu0 0.0
  %10874 = vmatpush1.msra.mxu0 0.0
  %10875 = vmatprep.subr.mxu0 0.0
  %10876 = vmatpush1.msra.mxu0 0.0
  %10877 = vmatprep.subr.mxu0 0.0
  %10878 = vmatpush1.msra.mxu0 0.0
  %10879 = vmatprep.subr.mxu0 0.0
  %10880 = vmatpush1.msra.mxu0 0.0
  %10881 = vmatprep.subr.mxu0 0.0
  %10882 = vmatpush1.msra.mxu0 0.0
  %10883 = vmatprep.subr.mxu0 0.0
  %10884 = vmatpush1.msra.mxu0 0.0
  %10885 = vmatprep.subr.mxu0 0.0
  %10886 = vmatpush1.msra.mxu0 0.0
  %10887 = vmatprep.subr.mxu0 0.0
  %10888 = vmatpush1.msra.mxu0 0.0
  %10889 = vmatprep.subr.mxu0 0.0
  %10890 = vmatpush1.msra.mxu0 0.0
  %10891 = vmatprep.subr.mxu0 0.0
  %10892 = vmatpush1.msra.mxu0 0.0
  %10893 = vmatprep.subr.mxu0 0.0
  %10894 = vmatpush1.msra.mxu0 0.0
  %10895 = vmatprep.subr.mxu0 0.0
  %10896 = vmatpush1.msra.mxu0 0.0
  %10897 = vmatprep.subr.mxu0 0.0
  %10898 = vmatpush1.msra.mxu0 0.0
  %10899 = vmatprep.subr.mxu0 0.0
  %10900 = vmatpush1.msra.mxu0 0.0
  %10901 = vmatprep.subr.mxu0 0.0
  %10902 = vmatpush1.msra.mxu0 0.0
  %10903 = vmatprep.subr.mxu0 0.0
  %10904 = vmatpush1.msra.mxu0 0.0
  %10905 = vmatprep.subr.mxu0 0.0
  %10906 = vmatpush1.msra.mxu0 0.0
  %10907 = vmatprep.subr.mxu0 0.0
  %10908 = vmatpush1.msra.mxu0 0.0
  %10909 = vmatprep.subr.mxu0 0.0
  %10910 = vmatpush1.msra.mxu0 0.0
  %10911 = vmatprep.subr.mxu0 0.0
  %10912 = vmatpush1.msra.mxu0 0.0
  %10913 = vmatprep.subr.mxu0 0.0
  %10914 = vmatpush1.msra.mxu0 0.0
  %10915 = vmatprep.mubr.f32.mxu0 0.0
  %10916 = vmatmul.mubr.f32.gmra.mrb[0].mxu0 %v10657
  %v10917 = vpop.f32.mrb[0].mxu0
  %v10918 = vadd.f32 0.0, %v10917
  %v10919 = vpop.f32.mrb[0].mxu0
  %10920 = vmatprep.mubr.f32.mxu0 0.0
  %10921 = vmatmul.mubr.f32.gmra.mrb[0].mxu0 %v10660
  %v10922 = vpop.f32.mrb[0].mxu0
  %v10923 = vadd.f32 0.0, %v10922
  %v10924 = vpop.f32.mrb[0].mxu0
  %10925 = vmatprep.mubr.f32.mxu0 0.0
  %10926 = vmatmul.mubr.f32.gmra.mrb[0].mxu0 %v10663
  %v10927 = vpop.f32.mrb[0].mxu0
  %v10928 = vadd.f32 0.0, %v10927
  %v10929 = vpop.f32.mrb[0].mxu0
  %10930 = vmatprep.mubr.f32.mxu0 0.0
  %10931 = vmatmul.mubr.f32.gmra.mrb[0].mxu0 %v10666
  %v10932 = vpop.f32.mrb[0].mxu0
  %v10933 = vadd.f32 0.0, %v10932
  %v10934 = vpop.f32.mrb[0].mxu0
  %10935 = vmatprep.mubr.f32.mxu0 0.0
  %10936 = vmatmul.mubr.f32.gmra.mrb[0].mxu0 %v10669
  %v10937 = vpop.f32.mrb[0].mxu0
  %v10938 = vadd.f32 0.0, %v10937
  %v10939 = vpop.f32.mrb[0].mxu0
  %10940 = vmatprep.mubr.f32.mxu0 0.0
  %10941 = vmatmul.mubr.f32.gmra.mrb[0].mxu0 %v10672
  %v10942 = vpop.f32.mrb[0].mxu0
  %v10943 = vadd.f32 0.0, %v10942
  %v10944 = vpop.f32.mrb[0].mxu0
  %10945 = vmatprep.mubr.f32.mxu0 0.0
  %10946 = vmatmul.mubr.f32.gmra.mrb[0].mxu0 %v10675
  %v10947 = vpop.f32.mrb[0].mxu0
  %v10948 = vadd.f32 0.0, %v10947
  %v10949 = vpop.f32.mrb[0].mxu0
  %10950 = vmatprep.mubr.f32.mxu0 0.0
  %10951 = vmatmul.mubr.f32.gmra.mrb[0].mxu0 %v10678
  %v10952 = vpop.f32.mrb[0].mxu0
  %v10953 = vadd.f32 0.0, %v10952
  %v10954 = vpop.f32.mrb[0].mxu0
  %10955 = vmatprep.mubr.f32.mxu0 0.0
  %10956 = vmatmul.mubr.f32.gmra.mrb[0].mxu0 %v10681
  %v10957 = vpop.f32.mrb[0].mxu0
  %v10958 = vadd.f32 0.0, %v10957
  %v10959 = vpop.f32.mrb[0].mxu0
  %10960 = vmatprep.mubr.f32.mxu0 0.0
  %10961 = vmatmul.mubr.f32.gmra.mrb[0].mxu0 %v10684
  %v10962 = vpop.f32.mrb[0].mxu0
  %v10963 = vadd.f32 0.0, %v10962
  %v10964 = vpop.f32.mrb[0].mxu0
  %10965 = vmatprep.mubr.f32.mxu0 0.0
  %10966 = vmatmul.mubr.f32.gmra.mrb[0].mxu0 %v10687
  %v10967 = vpop.f32.mrb[0].mxu0
  %v10968 = vadd.f32 0.0, %v10967
  %v10969 = vpop.f32.mrb[0].mxu0
  %10970 = vmatprep.mubr.f32.mxu0 0.0
  %10971 = vmatmul.mubr.f32.gmra.mrb[0].mxu0 %v10690
  %v10972 = vpop.f32.mrb[0].mxu0
  %v10973 = vadd.f32 0.0, %v10972
  %v10974 = vpop.f32.mrb[0].mxu0
  %10975 = vmatprep.mubr.f32.mxu0 0.0
  %10976 = vmatmul.mubr.f32.gmra.mrb[0].mxu0 %v10693
  %v10977 = vpop.f32.mrb[0].mxu0
  %v10978 = vadd.f32 0.0, %v10977
  %v10979 = vpop.f32.mrb[0].mxu0
  %10980 = vmatprep.mubr.f32.mxu0 0.0
  %10981 = vmatmul.mubr.f32.gmra.mrb[0].mxu0 %v10696
  %v10982 = vpop.f32.mrb[0].mxu0
  %v10983 = vadd.f32 0.0, %v10982
  %v10984 = vpop.f32.mrb[0].mxu0
  %10985 = vmatprep.mubr.f32.mxu0 0.0
  %10986 = vmatmul.mubr.f32.gmra.mrb[0].mxu0 %v10699
  %v10987 = vpop.f32.mrb[0].mxu0
  %v10988 = vadd.f32 0.0, %v10987
  %v10989 = vpop.f32.mrb[0].mxu0
  %10990 = vmatprep.mubr.f32.mxu0 0.0
  %10991 = vmatmul.mubr.f32.gmra.mrb[0].mxu0 %v10702
  %v10992 = vpop.f32.mrb[0].mxu0
  %v10993 = vadd.f32 0.0, %v10992
  %v10994 = vpop.f32.mrb[0].mxu0
  %10995 = vmatprep.mubr.f32.mxu0 0.0
  %10996 = vmatmul.mubr.f32.gmra.mrb[0].mxu0 %v10705
  %v10997 = vpop.f32.mrb[0].mxu0
  %v10998 = vadd.f32 0.0, %v10997
  %v10999 = vpop.f32.mrb[0].mxu0
  %11000 = vmatprep.mubr.f32.mxu0 0.0
  %11001 = vmatmul.mubr.f32.gmra.mrb[0].mxu0 %v10708
  %v11002 = vpop.f32.mrb[0].mxu0
  %v11003 = vadd.f32 0.0, %v11002
  %v11004 = vpop.f32.mrb[0].mxu0
  %11005 = vmatprep.mubr.f32.mxu0 0.0
  %11006 = vmatmul.mubr.f32.gmra.mrb[0].mxu0 %v10711
  %v11007 = vpop.f32.mrb[0].mxu0
  %v11008 = vadd.f32 0.0, %v11007
  %v11009 = vpop.f32.mrb[0].mxu0
  %11010 = vmatprep.mubr.f32.mxu0 0.0
  %11011 = vmatmul.mubr.f32.gmra.mrb[0].mxu0 %v10714
  %v11012 = vpop.f32.mrb[0].mxu0
  %v11013 = vadd.f32 0.0, %v11012
  %v11014 = vpop.f32.mrb[0].mxu0
  %11015 = vmatprep.mubr.f32.mxu0 0.0
  %11016 = vmatmul.mubr.f32.gmra.mrb[0].mxu0 %v10717
  %v11017 = vpop.f32.mrb[0].mxu0
  %v11018 = vadd.f32 0.0, %v11017
  %v11019 = vpop.f32.mrb[0].mxu0
  %11020 = vmatprep.mubr.f32.mxu0 0.0
  %11021 = vmatmul.mubr.f32.gmra.mrb[0].mxu0 %v10720
  %v11022 = vpop.f32.mrb[0].mxu0
  %v11023 = vadd.f32 0.0, %v11022
  %v11024 = vpop.f32.mrb[0].mxu0
  %11025 = vmatprep.mubr.f32.mxu0 0.0
  %11026 = vmatmul.mubr.f32.gmra.mrb[0].mxu0 %v10723
  %v11027 = vpop.f32.mrb[0].mxu0
  %v11028 = vadd.f32 0.0, %v11027
  %v11029 = vpop.f32.mrb[0].mxu0
  %11030 = vmatprep.mubr.f32.mxu0 0.0
  %11031 = vmatmul.mubr.f32.gmra.mrb[0].mxu0 %v10726
  %v11032 = vpop.f32.mrb[0].mxu0
  %v11033 = vadd.f32 0.0, %v11032
  %v11034 = vpop.f32.mrb[0].mxu0
  %11035 = vmatprep.mubr.f32.mxu0 0.0
  %11036 = vmatmul.mubr.f32.gmra.mrb[0].mxu0 %v10729
  %v11037 = vpop.f32.mrb[0].mxu0
  %v11038 = vadd.f32 0.0, %v11037
  %v11039 = vpop.f32.mrb[0].mxu0
  %11040 = vmatprep.mubr.f32.mxu0 0.0
  %11041 = vmatmul.mubr.f32.gmra.mrb[0].mxu0 %v10732
  %v11042 = vpop.f32.mrb[0].mxu0
  %v11043 = vadd.f32 0.0, %v11042
  %v11044 = vpop.f32.mrb[0].mxu0
  %11045 = vmatprep.mubr.f32.mxu0 0.0
  %11046 = vmatmul.mubr.f32.gmra.mrb[0].mxu0 %v10735
  %v11047 = vpop.f32.mrb[0].mxu0
  %v11048 = vadd.f32 0.0, %v11047
  %v11049 = vpop.f32.mrb[0].mxu0
  %11050 = vmatprep.mubr.f32.mxu0 0.0
  %11051 = vmatmul.mubr.f32.gmra.mrb[0].mxu0 %v10738
  %v11052 = vpop.f32.mrb[0].mxu0
  %v11053 = vadd.f32 0.0, %v11052
  %v11054 = vpop.f32.mrb[0].mxu0
  %11055 = vmatprep.mubr.f32.mxu0 0.0
  %11056 = vmatmul.mubr.f32.gmra.mrb[0].mxu0 %v10741
  %v11057 = vpop.f32.mrb[0].mxu0
  %v11058 = vadd.f32 0.0, %v11057
  %v11059 = vpop.f32.mrb[0].mxu0
  %11060 = vmatprep.mubr.f32.mxu0 0.0
  %11061 = vmatmul.mubr.f32.gmra.mrb[0].mxu0 %v10744
  %v11062 = vpop.f32.mrb[0].mxu0
  %v11063 = vadd.f32 0.0, %v11062
  %v11064 = vpop.f32.mrb[0].mxu0
  %11065 = vmatprep.mubr.f32.mxu0 0.0
  %11066 = vmatmul.mubr.f32.gmra.mrb[0].mxu0 %v10747
  %v11067 = vpop.f32.mrb[0].mxu0
  %v11068 = vadd.f32 0.0, %v11067
  %v11069 = vpop.f32.mrb[0].mxu0
  %11070 = vmatprep.mubr.f32.mxu0 0.0
  %11071 = vmatmul.mubr.f32.gmra.mrb[0].mxu0 %v10750
  %v11072 = vpop.f32.mrb[0].mxu0
  %v11073 = vadd.f32 0.0, %v11072
  %v11074 = vpop.f32.mrb[0].mxu0
  %11075 = vmatprep.mubr.f32.mxu0 0.0
  %11076 = vmatmul.mubr.f32.gmra.mrb[0].mxu0 %v10753
  %v11077 = vpop.f32.mrb[0].mxu0
  %v11078 = vadd.f32 0.0, %v11077
  %v11079 = vpop.f32.mrb[0].mxu0
  %11080 = vmatprep.mubr.f32.mxu0 0.0
  %11081 = vmatmul.mubr.f32.gmra.mrb[0].mxu0 %v10756
  %v11082 = vpop.f32.mrb[0].mxu0
  %v11083 = vadd.f32 0.0, %v11082
  %v11084 = vpop.f32.mrb[0].mxu0
  %11085 = vmatprep.mubr.f32.mxu0 0.0
  %11086 = vmatmul.mubr.f32.gmra.mrb[0].mxu0 %v10759
  %v11087 = vpop.f32.mrb[0].mxu0
  %v11088 = vadd.f32 0.0, %v11087
  %v11089 = vpop.f32.mrb[0].mxu0
  %11090 = vmatprep.mubr.f32.mxu0 0.0
  %11091 = vmatmul.mubr.f32.gmra.mrb[0].mxu0 %v10762
  %v11092 = vpop.f32.mrb[0].mxu0
  %v11093 = vadd.f32 0.0, %v11092
  %v11094 = vpop.f32.mrb[0].mxu0
  %11095 = vmatprep.mubr.f32.mxu0 0.0
  %11096 = vmatmul.mubr.f32.gmra.mrb[0].mxu0 %v10765
  %v11097 = vpop.f32.mrb[0].mxu0
  %v11098 = vadd.f32 0.0, %v11097
  %v11099 = vpop.f32.mrb[0].mxu0
  %11100 = vmatprep.mubr.f32.mxu0 0.0
  %11101 = vmatmul.mubr.f32.gmra.mrb[0].mxu0 %v10768
  %v11102 = vpop.f32.mrb[0].mxu0
  %v11103 = vadd.f32 0.0, %v11102
  %v11104 = vpop.f32.mrb[0].mxu0
  %11105 = vmatprep.mubr.f32.mxu0 0.0
  %11106 = vmatmul.mubr.f32.gmra.mrb[0].mxu0 %v10771
  %v11107 = vpop.f32.mrb[0].mxu0
  %v11108 = vadd.f32 0.0, %v11107
  %v11109 = vpop.f32.mrb[0].mxu0
  %11110 = vmatprep.mubr.f32.mxu0 0.0
  %11111 = vmatmul.mubr.f32.gmra.mrb[0].mxu0 %v10774
  %v11112 = vpop.f32.mrb[0].mxu0
  %v11113 = vadd.f32 0.0, %v11112
  %v11114 = vpop.f32.mrb[0].mxu0
  %11115 = vmatprep.mubr.f32.mxu0 0.0
  %11116 = vmatmul.mubr.f32.gmra.mrb[0].mxu0 %v10777
  %v11117 = vpop.f32.mrb[0].mxu0
  %v11118 = vadd.f32 0.0, %v11117
  %v11119 = vpop.f32.mrb[0].mxu0
  %11120 = vmatprep.mubr.f32.mxu0 0.0
  %11121 = vmatmul.mubr.f32.gmra.mrb[0].mxu0 %v10780
  %v11122 = vpop.f32.mrb[0].mxu0
  %v11123 = vadd.f32 0.0, %v11122
  %v11124 = vpop.f32.mrb[0].mxu0
  %11125 = vmatprep.mubr.f32.mxu0 0.0
  %11126 = vmatmul.mubr.f32.gmra.mrb[0].mxu0 %v10783
  %v11127 = vpop.f32.mrb[0].mxu0
  %v11128 = vadd.f32 0.0, %v11127
  %v11129 = vpop.f32.mrb[0].mxu0
  %11130 = vmatprep.mubr.f32.mxu0 0.0
  %11131 = vmatmul.mubr.f32.gmra.mrb[0].mxu0 %v10786
  %v11132 = vpop.f32.mrb[0].mxu0
  %v11133 = vadd.f32 0.0, %v11132
  %v11134 = vpop.f32.mrb[0].mxu0
  %11135 = vmatprep.mubr.f32.mxu0 0.0
  %11136 = vmatmul.mubr.f32.gmra.mrb[0].mxu0 %v10789
  %v11137 = vpop.f32.mrb[0].mxu0
  %v11138 = vadd.f32 0.0, %v11137
  %v11139 = vpop.f32.mrb[0].mxu0
  %11140 = vmatprep.mubr.f32.mxu0 0.0
  %11141 = vmatmul.mubr.f32.gmra.mrb[0].mxu0 %v10792
  %v11142 = vpop.f32.mrb[0].mxu0
  %v11143 = vadd.f32 0.0, %v11142
  %v11144 = vpop.f32.mrb[0].mxu0
  %11145 = vmatprep.mubr.f32.mxu0 0.0
  %11146 = vmatmul.mubr.f32.gmra.mrb[0].mxu0 %v10795
  %v11147 = vpop.f32.mrb[0].mxu0
  %v11148 = vadd.f32 0.0, %v11147
  %v11149 = vpop.f32.mrb[0].mxu0
  %11150 = vmatprep.mubr.f32.mxu0 0.0
  %11151 = vmatmul.mubr.f32.gmra.mrb[0].mxu0 %v10798
  %v11152 = vpop.f32.mrb[0].mxu0
  %v11153 = vadd.f32 0.0, %v11152
  %v11154 = vpop.f32.mrb[0].mxu0
  %11155 = vmatprep.mubr.f32.mxu0 0.0
  %11156 = vmatmul.mubr.f32.gmra.mrb[0].mxu0 %v10801
  %v11157 = vpop.f32.mrb[0].mxu0
  %v11158 = vadd.f32 0.0, %v11157
  %v11159 = vpop.f32.mrb[0].mxu0
  %11160 = vmatprep.mubr.f32.mxu0 0.0
  %11161 = vmatmul.mubr.f32.gmra.mrb[0].mxu0 %v10804
  %v11162 = vpop.f32.mrb[0].mxu0
  %v11163 = vadd.f32 0.0, %v11162
  %v11164 = vpop.f32.mrb[0].mxu0
  %11165 = vmatprep.mubr.f32.mxu0 0.0
  %11166 = vmatmul.mubr.f32.gmra.mrb[0].mxu0 %v10807
  %v11167 = vpop.f32.mrb[0].mxu0
  %v11168 = vadd.f32 0.0, %v11167
  %v11169 = vpop.f32.mrb[0].mxu0
  %11170 = vmatprep.mubr.f32.mxu0 0.0
  %11171 = vmatmul.mubr.f32.gmra.mrb[0].mxu0 %v10810
  %v11172 = vpop.f32.mrb[0].mxu0
  %v11173 = vadd.f32 0.0, %v11172
  %v11174 = vpop.f32.mrb[0].mxu0
  %11175 = vmatprep.mubr.f32.mxu0 0.0
  %11176 = vmatmul.mubr.f32.gmra.mrb[0].mxu0 %v10813
  %v11177 = vpop.f32.mrb[0].mxu0
  %v11178 = vadd.f32 0.0, %v11177
  %v11179 = vpop.f32.mrb[0].mxu0
  %11180 = vmatprep.mubr.f32.mxu0 0.0
  %11181 = vmatmul.mubr.f32.gmra.mrb[0].mxu0 %v10816
  %v11182 = vpop.f32.mrb[0].mxu0
  %v11183 = vadd.f32 0.0, %v11182
  %v11184 = vpop.f32.mrb[0].mxu0
  %11185 = vmatprep.mubr.f32.mxu0 0.0
  %11186 = vmatmul.mubr.f32.gmra.mrb[0].mxu0 %v10819
  %v11187 = vpop.f32.mrb[0].mxu0
  %v11188 = vadd.f32 0.0, %v11187
  %v11189 = vpop.f32.mrb[0].mxu0
  %11190 = vmatprep.mubr.f32.mxu0 0.0
  %11191 = vmatmul.mubr.f32.gmra.mrb[0].mxu0 %v10822
  %v11192 = vpop.f32.mrb[0].mxu0
  %v11193 = vadd.f32 0.0, %v11192
  %v11194 = vpop.f32.mrb[0].mxu0
  %11195 = vmatprep.mubr.f32.mxu0 0.0
  %11196 = vmatmul.mubr.f32.gmra.mrb[0].mxu0 %v10825
  %v11197 = vpop.f32.mrb[0].mxu0
  %v11198 = vadd.f32 0.0, %v11197
  %v11199 = vpop.f32.mrb[0].mxu0
  %11200 = vmatprep.mubr.f32.mxu0 0.0
  %11201 = vmatmul.mubr.f32.gmra.mrb[0].mxu0 %v10828
  %v11202 = vpop.f32.mrb[0].mxu0
  %v11203 = vadd.f32 0.0, %v11202
  %v11204 = vpop.f32.mrb[0].mxu0
  %11205 = vmatprep.mubr.f32.mxu0 0.0
  %11206 = vmatmul.mubr.f32.gmra.mrb[0].mxu0 %v10831
  %v11207 = vpop.f32.mrb[0].mxu0
  %v11208 = vadd.f32 0.0, %v11207
  %v11209 = vpop.f32.mrb[0].mxu0
  %11210 = vmatprep.mubr.f32.mxu0 0.0
  %11211 = vmatmul.mubr.f32.gmra.mrb[0].mxu0 %v10834
  %v11212 = vpop.f32.mrb[0].mxu0
  %v11213 = vadd.f32 0.0, %v11212
  %v11214 = vpop.f32.mrb[0].mxu0
  %11215 = vmatprep.mubr.f32.mxu0 0.0
  %11216 = vmatmul.mubr.f32.gmra.mrb[0].mxu0 %v10837
  %v11217 = vpop.f32.mrb[0].mxu0
  %v11218 = vadd.f32 0.0, %v11217
  %v11219 = vpop.f32.mrb[0].mxu0
  %11220 = vmatprep.mubr.f32.mxu0 0.0
  %11221 = vmatmul.mubr.f32.gmra.mrb[0].mxu0 %v10840
  %v11222 = vpop.f32.mrb[0].mxu0
  %v11223 = vadd.f32 0.0, %v11222
  %v11224 = vpop.f32.mrb[0].mxu0
  %11225 = vmatprep.mubr.f32.mxu0 0.0
  %11226 = vmatmul.mubr.f32.gmra.mrb[0].mxu0 %v10843
  %v11227 = vpop.f32.mrb[0].mxu0
  %v11228 = vadd.f32 0.0, %v11227
  %v11229 = vpop.f32.mrb[0].mxu0
  %11230 = vmatprep.mubr.f32.mxu0 0.0
  %11231 = vmatmul.mubr.f32.gmra.mrb[0].mxu0 %v10846
  %v11232 = vpop.f32.mrb[0].mxu0
  %v11233 = vadd.f32 0.0, %v11232
  %v11234 = vpop.f32.mrb[0].mxu0
  %11235 = vdwg.mxu0
  %v11236 = vadd.f32 %v10526, %v10918
  %v11237 = vadd.f32 %v10527, %v10923
  %v11238 = vadd.f32 %v10528, %v10928
  %v11239 = vadd.f32 %v10529, %v10933
  %v11240 = vadd.f32 %v10530, %v10938
  %v11241 = vadd.f32 %v10531, %v10943
  %v11242 = vadd.f32 %v10532, %v10948
  %v11243 = vadd.f32 %v10533, %v10953
  %v11244 = vadd.f32 %v10534, %v10958
  %v11245 = vadd.f32 %v10535, %v10963
  %v11246 = vadd.f32 %v10536, %v10968
  %v11247 = vadd.f32 %v10537, %v10973
  %v11248 = vadd.f32 %v10538, %v10978
  %v11249 = vadd.f32 %v10539, %v10983
  %v11250 = vadd.f32 %v10540, %v10988
  %v11251 = vadd.f32 %v10541, %v10993
  %v11252 = vadd.f32 %v10542, %v10998
  %v11253 = vadd.f32 %v10543, %v11003
  %v11254 = vadd.f32 %v10544, %v11008
  %v11255 = vadd.f32 %v10545, %v11013
  %v11256 = vadd.f32 %v10546, %v11018
  %v11257 = vadd.f32 %v10547, %v11023
  %v11258 = vadd.f32 %v10548, %v11028
  %v11259 = vadd.f32 %v10549, %v11033
  %v11260 = vadd.f32 %v10550, %v11038
  %v11261 = vadd.f32 %v10551, %v11043
  %v11262 = vadd.f32 %v10552, %v11048
  %v11263 = vadd.f32 %v10553, %v11053
  %v11264 = vadd.f32 %v10554, %v11058
  %v11265 = vadd.f32 %v10555, %v11063
  %v11266 = vadd.f32 %v10556, %v11068
  %v11267 = vadd.f32 %v10557, %v11073
  %v11268 = vadd.f32 %v10558, %v11078
  %v11269 = vadd.f32 %v10559, %v11083
  %v11270 = vadd.f32 %v10560, %v11088
  %v11271 = vadd.f32 %v10561, %v11093
  %v11272 = vadd.f32 %v10562, %v11098
  %v11273 = vadd.f32 %v10563, %v11103
  %v11274 = vadd.f32 %v10564, %v11108
  %v11275 = vadd.f32 %v10565, %v11113
  %v11276 = vadd.f32 %v10566, %v11118
  %v11277 = vadd.f32 %v10567, %v11123
  %v11278 = vadd.f32 %v10568, %v11128
  %v11279 = vadd.f32 %v10569, %v11133
  %v11280 = vadd.f32 %v10570, %v11138
  %v11281 = vadd.f32 %v10571, %v11143
  %v11282 = vadd.f32 %v10572, %v11148
  %v11283 = vadd.f32 %v10573, %v11153
  %v11284 = vadd.f32 %v10574, %v11158
  %v11285 = vadd.f32 %v10575, %v11163
  %v11286 = vadd.f32 %v10576, %v11168
  %v11287 = vadd.f32 %v10577, %v11173
  %v11288 = vadd.f32 %v10578, %v11178
  %v11289 = vadd.f32 %v10579, %v11183
  %v11290 = vadd.f32 %v10580, %v11188
  %v11291 = vadd.f32 %v10581, %v11193
  %v11292 = vadd.f32 %v10582, %v11198
  %v11293 = vadd.f32 %v10583, %v11203
  %v11294 = vadd.f32 %v10584, %v11208
  %v11295 = vadd.f32 %v10585, %v11213
  %v11296 = vadd.f32 %v10586, %v11218
  %v11297 = vadd.f32 %v10587, %v11223
  %v11298 = vadd.f32 %v10588, %v11228
  %v11299 = vadd.f32 %v10589, %v11233
  %v11300 = vld [vmem:[%s4369] sm:$0xff]
  %v11301 = vld [vmem:[%s4369 + $0x8] sm:$0xff]
  %v11302 = vld [vmem:[%s4369 + $0x18] sm:$0xff]
  %v11303 = vld [vmem:[%s4369 + $0x20] sm:$0xff]
  %v11304 = vld [vmem:[%s4369 + $0x30] sm:$0xff]
  %v11305 = vld [vmem:[%s4369 + $0x38] sm:$0xff]
  %v11306 = vld [vmem:[%s4369 + $0x48] sm:$0xff]
  %v11307 = vld [vmem:[%s4369 + $0x50] sm:$0xff]
  %v11308 = vld [vmem:[%s4369 + $0x60] sm:$0xff]
  %v11309 = vld [vmem:[%s4369 + $0x68] sm:$0xff]
  %v11310 = vld [vmem:[%s4369 + $0x78] sm:$0xff]
  %v11311 = vld [vmem:[%s4369 + $0x80] sm:$0xff]
  %v11312 = vld [vmem:[%s4369 + $0x90] sm:$0xff]
  %v11313 = vld [vmem:[%s4369 + $0x98] sm:$0xff]
  %v11314 = vld [vmem:[%s4369 + $0xa8] sm:$0xff]
  %v11315 = vld [vmem:[%s4369 + $0xb0] sm:$0xff]
  %v11316 = vld [vmem:[%s4369 + $0xc0] sm:$0xff]
  %v11317 = vld [vmem:[%s4369 + $0xc8] sm:$0xff]
  %v11318 = vld [vmem:[%s4369 + $0xd8] sm:$0xff]
  %v11319 = vld [vmem:[%s4369 + $0xe0] sm:$0xff]
  %v11320 = vld [vmem:[%s4369 + $0xf0] sm:$0xff]
  %v11321 = vld [vmem:[%s4369 + $0xf8] sm:$0xff]
  %v11322 = vld [vmem:[%s4369 + $0x108] sm:$0xff]
  %v11323 = vld [vmem:[%s4369 + $0x110] sm:$0xff]
  %v11324 = vld [vmem:[%s4369 + $0x120] sm:$0xff]
  %v11325 = vld [vmem:[%s4369 + $0x128] sm:$0xff]
  %v11326 = vld [vmem:[%s4369 + $0x138] sm:$0xff]
  %v11327 = vld [vmem:[%s4369 + $0x140] sm:$0xff]
  %v11328 = vld [vmem:[%s4369 + $0x150] sm:$0xff]
  %v11329 = vld [vmem:[%s4369 + $0x158] sm:$0xff]
  %v11330 = vld [vmem:[%s4369 + $0x168] sm:$0xff]
  %v11331 = vld [vmem:[%s4369 + $0x170] sm:$0xff]
  %v11332 = vld [vmem:[%s4369 + $0x1b0] sm:$0xff]
  %v11333 = vld [vmem:[%s4369 + $0x1b8] sm:$0xff]
  %v11334 = vld [vmem:[%s4369 + $0x1c8] sm:$0xff]
  %v11335 = vld [vmem:[%s4369 + $0x1d0] sm:$0xff]
  %v11336 = vld [vmem:[%s4369 + $0x1e0] sm:$0xff]
  %v11337 = vld [vmem:[%s4369 + $0x1e8] sm:$0xff]
  %v11338 = vld [vmem:[%s4369 + $0x1f8] sm:$0xff]
  %v11339 = vld [vmem:[%s4369 + $0x200] sm:$0xff]
  %v11340 = vld [vmem:[%s4369 + $0x210] sm:$0xff]
  %v11341 = vld [vmem:[%s4369 + $0x218] sm:$0xff]
  %v11342 = vld [vmem:[%s4369 + $0x228] sm:$0xff]
  %v11343 = vld [vmem:[%s4369 + $0x230] sm:$0xff]
  %v11344 = vld [vmem:[%s4369 + $0x240] sm:$0xff]
  %v11345 = vld [vmem:[%s4369 + $0x248] sm:$0xff]
  %v11346 = vld [vmem:[%s4369 + $0x258] sm:$0xff]
  %v11347 = vld [vmem:[%s4369 + $0x260] sm:$0xff]
  %v11348 = vld [vmem:[%s4369 + $0x270] sm:$0xff]
  %v11349 = vld [vmem:[%s4369 + $0x278] sm:$0xff]
  %v11350 = vld [vmem:[%s4369 + $0x288] sm:$0xff]
  %v11351 = vld [vmem:[%s4369 + $0x290] sm:$0xff]
  %v11352 = vld [vmem:[%s4369 + $0x2a0] sm:$0xff]
  %v11353 = vld [vmem:[%s4369 + $0x2a8] sm:$0xff]
  %v11354 = vld [vmem:[%s4369 + $0x2b8] sm:$0xff]
  %v11355 = vld [vmem:[%s4369 + $0x2c0] sm:$0xff]
  %v11356 = vld [vmem:[%s4369 + $0x2d0] sm:$0xff]
  %v11357 = vld [vmem:[%s4369 + $0x2d8] sm:$0xff]
  %v11358 = vld [vmem:[%s4369 + $0x2e8] sm:$0xff]
  %v11359 = vld [vmem:[%s4369 + $0x2f0] sm:$0xff]
  %v11360 = vld [vmem:[%s4369 + $0x300] sm:$0xff]
  %v11361 = vld [vmem:[%s4369 + $0x308] sm:$0xff]
  %v11362 = vld [vmem:[%s4369 + $0x318] sm:$0xff]
  %v11363 = vld [vmem:[%s4369 + $0x320] sm:$0xff]
  %s11364 = scalar_lea.vmem %s2, 24
  %v11365 = vld [vmem:[%s11364] sm:$0xf]
  %v11367 = vsel %vm90, %v11300, 0
  %v11370 = vsel %vm90, %v11301, 0
  %v11373 = vsel %vm90, %v11302, 0
  %v11376 = vsel %vm90, %v11303, 0
  %v11379 = vsel %vm90, %v11304, 0
  %v11382 = vsel %vm90, %v11305, 0
  %v11385 = vsel %vm90, %v11306, 0
  %v11388 = vsel %vm90, %v11307, 0
  %v11391 = vsel %vm90, %v11308, 0
  %v11394 = vsel %vm90, %v11309, 0
  %v11397 = vsel %vm90, %v11310, 0
  %v11400 = vsel %vm90, %v11311, 0
  %v11403 = vsel %vm90, %v11312, 0
  %v11406 = vsel %vm90, %v11313, 0
  %v11409 = vsel %vm90, %v11314, 0
  %v11412 = vsel %vm90, %v11315, 0
  %v11415 = vsel %vm90, %v11316, 0
  %v11418 = vsel %vm90, %v11317, 0
  %v11421 = vsel %vm90, %v11318, 0
  %v11424 = vsel %vm90, %v11319, 0
  %v11427 = vsel %vm90, %v11320, 0
  %v11430 = vsel %vm90, %v11321, 0
  %v11433 = vsel %vm90, %v11322, 0
  %v11436 = vsel %vm90, %v11323, 0
  %v11439 = vsel %vm90, %v11324, 0
  %v11442 = vsel %vm90, %v11325, 0
  %v11445 = vsel %vm90, %v11326, 0
  %v11448 = vsel %vm90, %v11327, 0
  %v11451 = vsel %vm90, %v11328, 0
  %v11454 = vsel %vm90, %v11329, 0
  %v11457 = vsel %vm90, %v11330, 0
  %v11460 = vsel %vm90, %v11331, 0
  %v11463 = vsel %vm90, %v11332, 0
  %v11466 = vsel %vm90, %v11333, 0
  %v11469 = vsel %vm90, %v11334, 0
  %v11472 = vsel %vm90, %v11335, 0
  %v11475 = vsel %vm90, %v11336, 0
  %v11478 = vsel %vm90, %v11337, 0
  %v11481 = vsel %vm90, %v11338, 0
  %v11484 = vsel %vm90, %v11339, 0
  %v11487 = vsel %vm90, %v11340, 0
  %v11490 = vsel %vm90, %v11341, 0
  %v11493 = vsel %vm90, %v11342, 0
  %v11496 = vsel %vm90, %v11343, 0
  %v11499 = vsel %vm90, %v11344, 0
  %v11502 = vsel %vm90, %v11345, 0
  %v11505 = vsel %vm90, %v11346, 0
  %v11508 = vsel %vm90, %v11347, 0
  %v11511 = vsel %vm90, %v11348, 0
  %v11514 = vsel %vm90, %v11349, 0
  %v11517 = vsel %vm90, %v11350, 0
  %v11520 = vsel %vm90, %v11351, 0
  %v11523 = vsel %vm90, %v11352, 0
  %v11526 = vsel %vm90, %v11353, 0
  %v11529 = vsel %vm90, %v11354, 0
  %v11532 = vsel %vm90, %v11355, 0
  %v11535 = vsel %vm90, %v11356, 0
  %v11538 = vsel %vm90, %v11357, 0
  %v11541 = vsel %vm90, %v11358, 0
  %v11544 = vsel %vm90, %v11359, 0
  %v11547 = vsel %vm90, %v11360, 0
  %v11550 = vsel %vm90, %v11361, 0
  %v11553 = vsel %vm90, %v11362, 0
  %v11556 = vsel %vm90, %v11363, 0
  %v11559 = vsel %vm560, %v11365, 0
  %11561 = vmatprep.subr.mxu0 0.0
  %11562 = vmatpush1.msra.mxu0 %v11559
  %11563 = vmatprep.subr.mxu0 0.0
  %11564 = vmatpush1.msra.mxu0 0.0
  %11565 = vmatprep.subr.mxu0 0.0
  %11566 = vmatpush1.msra.mxu0 0.0
  %11567 = vmatprep.subr.mxu0 0.0
  %11568 = vmatpush1.msra.mxu0 0.0
  %11569 = vmatprep.subr.mxu0 0.0
  %11570 = vmatpush1.msra.mxu0 0.0
  %11571 = vmatprep.subr.mxu0 0.0
  %11572 = vmatpush1.msra.mxu0 0.0
  %11573 = vmatprep.subr.mxu0 0.0
  %11574 = vmatpush1.msra.mxu0 0.0
  %11575 = vmatprep.subr.mxu0 0.0
  %11576 = vmatpush1.msra.mxu0 0.0
  %11577 = vmatprep.subr.mxu0 0.0
  %11578 = vmatpush1.msra.mxu0 0.0
  %11579 = vmatprep.subr.mxu0 0.0
  %11580 = vmatpush1.msra.mxu0 0.0
  %11581 = vmatprep.subr.mxu0 0.0
  %11582 = vmatpush1.msra.mxu0 0.0
  %11583 = vmatprep.subr.mxu0 0.0
  %11584 = vmatpush1.msra.mxu0 0.0
  %11585 = vmatprep.subr.mxu0 0.0
  %11586 = vmatpush1.msra.mxu0 0.0
  %11587 = vmatprep.subr.mxu0 0.0
  %11588 = vmatpush1.msra.mxu0 0.0
  %11589 = vmatprep.subr.mxu0 0.0
  %11590 = vmatpush1.msra.mxu0 0.0
  %11591 = vmatprep.subr.mxu0 0.0
  %11592 = vmatpush1.msra.mxu0 0.0
  %11593 = vmatprep.subr.mxu0 0.0
  %11594 = vmatpush1.msra.mxu0 0.0
  %11595 = vmatprep.subr.mxu0 0.0
  %11596 = vmatpush1.msra.mxu0 0.0
  %11597 = vmatprep.subr.mxu0 0.0
  %11598 = vmatpush1.msra.mxu0 0.0
  %11599 = vmatprep.subr.mxu0 0.0
  %11600 = vmatpush1.msra.mxu0 0.0
  %11601 = vmatprep.subr.mxu0 0.0
  %11602 = vmatpush1.msra.mxu0 0.0
  %11603 = vmatprep.subr.mxu0 0.0
  %11604 = vmatpush1.msra.mxu0 0.0
  %11605 = vmatprep.subr.mxu0 0.0
  %11606 = vmatpush1.msra.mxu0 0.0
  %11607 = vmatprep.subr.mxu0 0.0
  %11608 = vmatpush1.msra.mxu0 0.0
  %11609 = vmatprep.subr.mxu0 0.0
  %11610 = vmatpush1.msra.mxu0 0.0
  %11611 = vmatprep.subr.mxu0 0.0
  %11612 = vmatpush1.msra.mxu0 0.0
  %11613 = vmatprep.subr.mxu0 0.0
  %11614 = vmatpush1.msra.mxu0 0.0
  %11615 = vmatprep.subr.mxu0 0.0
  %11616 = vmatpush1.msra.mxu0 0.0
  %11617 = vmatprep.subr.mxu0 0.0
  %11618 = vmatpush1.msra.mxu0 0.0
  %11619 = vmatprep.subr.mxu0 0.0
  %11620 = vmatpush1.msra.mxu0 0.0
  %11621 = vmatprep.subr.mxu0 0.0
  %11622 = vmatpush1.msra.mxu0 0.0
  %11623 = vmatprep.subr.mxu0 0.0
  %11624 = vmatpush1.msra.mxu0 0.0
  %11625 = vmatprep.mubr.f32.mxu0 0.0
  %11626 = vmatmul.mubr.f32.gmra.mrb[0].mxu0 %v11367
  %v11627 = vpop.f32.mrb[0].mxu0
  %v11628 = vadd.f32 0.0, %v11627
  %v11629 = vpop.f32.mrb[0].mxu0
  %11630 = vmatprep.mubr.f32.mxu0 0.0
  %11631 = vmatmul.mubr.f32.gmra.mrb[0].mxu0 %v11370
  %v11632 = vpop.f32.mrb[0].mxu0
  %v11633 = vadd.f32 0.0, %v11632
  %v11634 = vpop.f32.mrb[0].mxu0
  %11635 = vmatprep.mubr.f32.mxu0 0.0
  %11636 = vmatmul.mubr.f32.gmra.mrb[0].mxu0 %v11373
  %v11637 = vpop.f32.mrb[0].mxu0
  %v11638 = vadd.f32 0.0, %v11637
  %v11639 = vpop.f32.mrb[0].mxu0
  %11640 = vmatprep.mubr.f32.mxu0 0.0
  %11641 = vmatmul.mubr.f32.gmra.mrb[0].mxu0 %v11376
  %v11642 = vpop.f32.mrb[0].mxu0
  %v11643 = vadd.f32 0.0, %v11642
  %v11644 = vpop.f32.mrb[0].mxu0
  %11645 = vmatprep.mubr.f32.mxu0 0.0
  %11646 = vmatmul.mubr.f32.gmra.mrb[0].mxu0 %v11379
  %v11647 = vpop.f32.mrb[0].mxu0
  %v11648 = vadd.f32 0.0, %v11647
  %v11649 = vpop.f32.mrb[0].mxu0
  %11650 = vmatprep.mubr.f32.mxu0 0.0
  %11651 = vmatmul.mubr.f32.gmra.mrb[0].mxu0 %v11382
  %v11652 = vpop.f32.mrb[0].mxu0
  %v11653 = vadd.f32 0.0, %v11652
  %v11654 = vpop.f32.mrb[0].mxu0
  %11655 = vmatprep.mubr.f32.mxu0 0.0
  %11656 = vmatmul.mubr.f32.gmra.mrb[0].mxu0 %v11385
  %v11657 = vpop.f32.mrb[0].mxu0
  %v11658 = vadd.f32 0.0, %v11657
  %v11659 = vpop.f32.mrb[0].mxu0
  %11660 = vmatprep.mubr.f32.mxu0 0.0
  %11661 = vmatmul.mubr.f32.gmra.mrb[0].mxu0 %v11388
  %v11662 = vpop.f32.mrb[0].mxu0
  %v11663 = vadd.f32 0.0, %v11662
  %v11664 = vpop.f32.mrb[0].mxu0
  %11665 = vmatprep.mubr.f32.mxu0 0.0
  %11666 = vmatmul.mubr.f32.gmra.mrb[0].mxu0 %v11391
  %v11667 = vpop.f32.mrb[0].mxu0
  %v11668 = vadd.f32 0.0, %v11667
  %v11669 = vpop.f32.mrb[0].mxu0
  %11670 = vmatprep.mubr.f32.mxu0 0.0
  %11671 = vmatmul.mubr.f32.gmra.mrb[0].mxu0 %v11394
  %v11672 = vpop.f32.mrb[0].mxu0
  %v11673 = vadd.f32 0.0, %v11672
  %v11674 = vpop.f32.mrb[0].mxu0
  %11675 = vmatprep.mubr.f32.mxu0 0.0
  %11676 = vmatmul.mubr.f32.gmra.mrb[0].mxu0 %v11397
  %v11677 = vpop.f32.mrb[0].mxu0
  %v11678 = vadd.f32 0.0, %v11677
  %v11679 = vpop.f32.mrb[0].mxu0
  %11680 = vmatprep.mubr.f32.mxu0 0.0
  %11681 = vmatmul.mubr.f32.gmra.mrb[0].mxu0 %v11400
  %v11682 = vpop.f32.mrb[0].mxu0
  %v11683 = vadd.f32 0.0, %v11682
  %v11684 = vpop.f32.mrb[0].mxu0
  %11685 = vmatprep.mubr.f32.mxu0 0.0
  %11686 = vmatmul.mubr.f32.gmra.mrb[0].mxu0 %v11403
  %v11687 = vpop.f32.mrb[0].mxu0
  %v11688 = vadd.f32 0.0, %v11687
  %v11689 = vpop.f32.mrb[0].mxu0
  %11690 = vmatprep.mubr.f32.mxu0 0.0
  %11691 = vmatmul.mubr.f32.gmra.mrb[0].mxu0 %v11406
  %v11692 = vpop.f32.mrb[0].mxu0
  %v11693 = vadd.f32 0.0, %v11692
  %v11694 = vpop.f32.mrb[0].mxu0
  %11695 = vmatprep.mubr.f32.mxu0 0.0
  %11696 = vmatmul.mubr.f32.gmra.mrb[0].mxu0 %v11409
  %v11697 = vpop.f32.mrb[0].mxu0
  %v11698 = vadd.f32 0.0, %v11697
  %v11699 = vpop.f32.mrb[0].mxu0
  %11700 = vmatprep.mubr.f32.mxu0 0.0
  %11701 = vmatmul.mubr.f32.gmra.mrb[0].mxu0 %v11412
  %v11702 = vpop.f32.mrb[0].mxu0
  %v11703 = vadd.f32 0.0, %v11702
  %v11704 = vpop.f32.mrb[0].mxu0
  %11705 = vmatprep.mubr.f32.mxu0 0.0
  %11706 = vmatmul.mubr.f32.gmra.mrb[0].mxu0 %v11415
  %v11707 = vpop.f32.mrb[0].mxu0
  %v11708 = vadd.f32 0.0, %v11707
  %v11709 = vpop.f32.mrb[0].mxu0
  %11710 = vmatprep.mubr.f32.mxu0 0.0
  %11711 = vmatmul.mubr.f32.gmra.mrb[0].mxu0 %v11418
  %v11712 = vpop.f32.mrb[0].mxu0
  %v11713 = vadd.f32 0.0, %v11712
  %v11714 = vpop.f32.mrb[0].mxu0
  %11715 = vmatprep.mubr.f32.mxu0 0.0
  %11716 = vmatmul.mubr.f32.gmra.mrb[0].mxu0 %v11421
  %v11717 = vpop.f32.mrb[0].mxu0
  %v11718 = vadd.f32 0.0, %v11717
  %v11719 = vpop.f32.mrb[0].mxu0
  %11720 = vmatprep.mubr.f32.mxu0 0.0
  %11721 = vmatmul.mubr.f32.gmra.mrb[0].mxu0 %v11424
  %v11722 = vpop.f32.mrb[0].mxu0
  %v11723 = vadd.f32 0.0, %v11722
  %v11724 = vpop.f32.mrb[0].mxu0
  %11725 = vmatprep.mubr.f32.mxu0 0.0
  %11726 = vmatmul.mubr.f32.gmra.mrb[0].mxu0 %v11427
  %v11727 = vpop.f32.mrb[0].mxu0
  %v11728 = vadd.f32 0.0, %v11727
  %v11729 = vpop.f32.mrb[0].mxu0
  %11730 = vmatprep.mubr.f32.mxu0 0.0
  %11731 = vmatmul.mubr.f32.gmra.mrb[0].mxu0 %v11430
  %v11732 = vpop.f32.mrb[0].mxu0
  %v11733 = vadd.f32 0.0, %v11732
  %v11734 = vpop.f32.mrb[0].mxu0
  %11735 = vmatprep.mubr.f32.mxu0 0.0
  %11736 = vmatmul.mubr.f32.gmra.mrb[0].mxu0 %v11433
  %v11737 = vpop.f32.mrb[0].mxu0
  %v11738 = vadd.f32 0.0, %v11737
  %v11739 = vpop.f32.mrb[0].mxu0
  %11740 = vmatprep.mubr.f32.mxu0 0.0
  %11741 = vmatmul.mubr.f32.gmra.mrb[0].mxu0 %v11436
  %v11742 = vpop.f32.mrb[0].mxu0
  %v11743 = vadd.f32 0.0, %v11742
  %v11744 = vpop.f32.mrb[0].mxu0
  %11745 = vmatprep.mubr.f32.mxu0 0.0
  %11746 = vmatmul.mubr.f32.gmra.mrb[0].mxu0 %v11439
  %v11747 = vpop.f32.mrb[0].mxu0
  %v11748 = vadd.f32 0.0, %v11747
  %v11749 = vpop.f32.mrb[0].mxu0
  %11750 = vmatprep.mubr.f32.mxu0 0.0
  %11751 = vmatmul.mubr.f32.gmra.mrb[0].mxu0 %v11442
  %v11752 = vpop.f32.mrb[0].mxu0
  %v11753 = vadd.f32 0.0, %v11752
  %v11754 = vpop.f32.mrb[0].mxu0
  %11755 = vmatprep.mubr.f32.mxu0 0.0
  %11756 = vmatmul.mubr.f32.gmra.mrb[0].mxu0 %v11445
  %v11757 = vpop.f32.mrb[0].mxu0
  %v11758 = vadd.f32 0.0, %v11757
  %v11759 = vpop.f32.mrb[0].mxu0
  %11760 = vmatprep.mubr.f32.mxu0 0.0
  %11761 = vmatmul.mubr.f32.gmra.mrb[0].mxu0 %v11448
  %v11762 = vpop.f32.mrb[0].mxu0
  %v11763 = vadd.f32 0.0, %v11762
  %v11764 = vpop.f32.mrb[0].mxu0
  %11765 = vmatprep.mubr.f32.mxu0 0.0
  %11766 = vmatmul.mubr.f32.gmra.mrb[0].mxu0 %v11451
  %v11767 = vpop.f32.mrb[0].mxu0
  %v11768 = vadd.f32 0.0, %v11767
  %v11769 = vpop.f32.mrb[0].mxu0
  %11770 = vmatprep.mubr.f32.mxu0 0.0
  %11771 = vmatmul.mubr.f32.gmra.mrb[0].mxu0 %v11454
  %v11772 = vpop.f32.mrb[0].mxu0
  %v11773 = vadd.f32 0.0, %v11772
  %v11774 = vpop.f32.mrb[0].mxu0
  %11775 = vmatprep.mubr.f32.mxu0 0.0
  %11776 = vmatmul.mubr.f32.gmra.mrb[0].mxu0 %v11457
  %v11777 = vpop.f32.mrb[0].mxu0
  %v11778 = vadd.f32 0.0, %v11777
  %v11779 = vpop.f32.mrb[0].mxu0
  %11780 = vmatprep.mubr.f32.mxu0 0.0
  %11781 = vmatmul.mubr.f32.gmra.mrb[0].mxu0 %v11460
  %v11782 = vpop.f32.mrb[0].mxu0
  %v11783 = vadd.f32 0.0, %v11782
  %v11784 = vpop.f32.mrb[0].mxu0
  %11785 = vmatprep.mubr.f32.mxu0 0.0
  %11786 = vmatmul.mubr.f32.gmra.mrb[0].mxu0 %v11463
  %v11787 = vpop.f32.mrb[0].mxu0
  %v11788 = vadd.f32 0.0, %v11787
  %v11789 = vpop.f32.mrb[0].mxu0
  %11790 = vmatprep.mubr.f32.mxu0 0.0
  %11791 = vmatmul.mubr.f32.gmra.mrb[0].mxu0 %v11466
  %v11792 = vpop.f32.mrb[0].mxu0
  %v11793 = vadd.f32 0.0, %v11792
  %v11794 = vpop.f32.mrb[0].mxu0
  %11795 = vmatprep.mubr.f32.mxu0 0.0
  %11796 = vmatmul.mubr.f32.gmra.mrb[0].mxu0 %v11469
  %v11797 = vpop.f32.mrb[0].mxu0
  %v11798 = vadd.f32 0.0, %v11797
  %v11799 = vpop.f32.mrb[0].mxu0
  %11800 = vmatprep.mubr.f32.mxu0 0.0
  %11801 = vmatmul.mubr.f32.gmra.mrb[0].mxu0 %v11472
  %v11802 = vpop.f32.mrb[0].mxu0
  %v11803 = vadd.f32 0.0, %v11802
  %v11804 = vpop.f32.mrb[0].mxu0
  %11805 = vmatprep.mubr.f32.mxu0 0.0
  %11806 = vmatmul.mubr.f32.gmra.mrb[0].mxu0 %v11475
  %v11807 = vpop.f32.mrb[0].mxu0
  %v11808 = vadd.f32 0.0, %v11807
  %v11809 = vpop.f32.mrb[0].mxu0
  %11810 = vmatprep.mubr.f32.mxu0 0.0
  %11811 = vmatmul.mubr.f32.gmra.mrb[0].mxu0 %v11478
  %v11812 = vpop.f32.mrb[0].mxu0
  %v11813 = vadd.f32 0.0, %v11812
  %v11814 = vpop.f32.mrb[0].mxu0
  %11815 = vmatprep.mubr.f32.mxu0 0.0
  %11816 = vmatmul.mubr.f32.gmra.mrb[0].mxu0 %v11481
  %v11817 = vpop.f32.mrb[0].mxu0
  %v11818 = vadd.f32 0.0, %v11817
  %v11819 = vpop.f32.mrb[0].mxu0
  %11820 = vmatprep.mubr.f32.mxu0 0.0
  %11821 = vmatmul.mubr.f32.gmra.mrb[0].mxu0 %v11484
  %v11822 = vpop.f32.mrb[0].mxu0
  %v11823 = vadd.f32 0.0, %v11822
  %v11824 = vpop.f32.mrb[0].mxu0
  %11825 = vmatprep.mubr.f32.mxu0 0.0
  %11826 = vmatmul.mubr.f32.gmra.mrb[0].mxu0 %v11487
  %v11827 = vpop.f32.mrb[0].mxu0
  %v11828 = vadd.f32 0.0, %v11827
  %v11829 = vpop.f32.mrb[0].mxu0
  %11830 = vmatprep.mubr.f32.mxu0 0.0
  %11831 = vmatmul.mubr.f32.gmra.mrb[0].mxu0 %v11490
  %v11832 = vpop.f32.mrb[0].mxu0
  %v11833 = vadd.f32 0.0, %v11832
  %v11834 = vpop.f32.mrb[0].mxu0
  %11835 = vmatprep.mubr.f32.mxu0 0.0
  %11836 = vmatmul.mubr.f32.gmra.mrb[0].mxu0 %v11493
  %v11837 = vpop.f32.mrb[0].mxu0
  %v11838 = vadd.f32 0.0, %v11837
  %v11839 = vpop.f32.mrb[0].mxu0
  %11840 = vmatprep.mubr.f32.mxu0 0.0
  %11841 = vmatmul.mubr.f32.gmra.mrb[0].mxu0 %v11496
  %v11842 = vpop.f32.mrb[0].mxu0
  %v11843 = vadd.f32 0.0, %v11842
  %v11844 = vpop.f32.mrb[0].mxu0
  %11845 = vmatprep.mubr.f32.mxu0 0.0
  %11846 = vmatmul.mubr.f32.gmra.mrb[0].mxu0 %v11499
  %v11847 = vpop.f32.mrb[0].mxu0
  %v11848 = vadd.f32 0.0, %v11847
  %v11849 = vpop.f32.mrb[0].mxu0
  %11850 = vmatprep.mubr.f32.mxu0 0.0
  %11851 = vmatmul.mubr.f32.gmra.mrb[0].mxu0 %v11502
  %v11852 = vpop.f32.mrb[0].mxu0
  %v11853 = vadd.f32 0.0, %v11852
  %v11854 = vpop.f32.mrb[0].mxu0
  %11855 = vmatprep.mubr.f32.mxu0 0.0
  %11856 = vmatmul.mubr.f32.gmra.mrb[0].mxu0 %v11505
  %v11857 = vpop.f32.mrb[0].mxu0
  %v11858 = vadd.f32 0.0, %v11857
  %v11859 = vpop.f32.mrb[0].mxu0
  %11860 = vmatprep.mubr.f32.mxu0 0.0
  %11861 = vmatmul.mubr.f32.gmra.mrb[0].mxu0 %v11508
  %v11862 = vpop.f32.mrb[0].mxu0
  %v11863 = vadd.f32 0.0, %v11862
  %v11864 = vpop.f32.mrb[0].mxu0
  %11865 = vmatprep.mubr.f32.mxu0 0.0
  %11866 = vmatmul.mubr.f32.gmra.mrb[0].mxu0 %v11511
  %v11867 = vpop.f32.mrb[0].mxu0
  %v11868 = vadd.f32 0.0, %v11867
  %v11869 = vpop.f32.mrb[0].mxu0
  %11870 = vmatprep.mubr.f32.mxu0 0.0
  %11871 = vmatmul.mubr.f32.gmra.mrb[0].mxu0 %v11514
  %v11872 = vpop.f32.mrb[0].mxu0
  %v11873 = vadd.f32 0.0, %v11872
  %v11874 = vpop.f32.mrb[0].mxu0
  %11875 = vmatprep.mubr.f32.mxu0 0.0
  %11876 = vmatmul.mubr.f32.gmra.mrb[0].mxu0 %v11517
  %v11877 = vpop.f32.mrb[0].mxu0
  %v11878 = vadd.f32 0.0, %v11877
  %v11879 = vpop.f32.mrb[0].mxu0
  %11880 = vmatprep.mubr.f32.mxu0 0.0
  %11881 = vmatmul.mubr.f32.gmra.mrb[0].mxu0 %v11520
  %v11882 = vpop.f32.mrb[0].mxu0
  %v11883 = vadd.f32 0.0, %v11882
  %v11884 = vpop.f32.mrb[0].mxu0
  %11885 = vmatprep.mubr.f32.mxu0 0.0
  %11886 = vmatmul.mubr.f32.gmra.mrb[0].mxu0 %v11523
  %v11887 = vpop.f32.mrb[0].mxu0
  %v11888 = vadd.f32 0.0, %v11887
  %v11889 = vpop.f32.mrb[0].mxu0
  %11890 = vmatprep.mubr.f32.mxu0 0.0
  %11891 = vmatmul.mubr.f32.gmra.mrb[0].mxu0 %v11526
  %v11892 = vpop.f32.mrb[0].mxu0
  %v11893 = vadd.f32 0.0, %v11892
  %v11894 = vpop.f32.mrb[0].mxu0
  %11895 = vmatprep.mubr.f32.mxu0 0.0
  %11896 = vmatmul.mubr.f32.gmra.mrb[0].mxu0 %v11529
  %v11897 = vpop.f32.mrb[0].mxu0
  %v11898 = vadd.f32 0.0, %v11897
  %v11899 = vpop.f32.mrb[0].mxu0
  %11900 = vmatprep.mubr.f32.mxu0 0.0
  %11901 = vmatmul.mubr.f32.gmra.mrb[0].mxu0 %v11532
  %v11902 = vpop.f32.mrb[0].mxu0
  %v11903 = vadd.f32 0.0, %v11902
  %v11904 = vpop.f32.mrb[0].mxu0
  %11905 = vmatprep.mubr.f32.mxu0 0.0
  %11906 = vmatmul.mubr.f32.gmra.mrb[0].mxu0 %v11535
  %v11907 = vpop.f32.mrb[0].mxu0
  %v11908 = vadd.f32 0.0, %v11907
  %v11909 = vpop.f32.mrb[0].mxu0
  %11910 = vmatprep.mubr.f32.mxu0 0.0
  %11911 = vmatmul.mubr.f32.gmra.mrb[0].mxu0 %v11538
  %v11912 = vpop.f32.mrb[0].mxu0
  %v11913 = vadd.f32 0.0, %v11912
  %v11914 = vpop.f32.mrb[0].mxu0
  %11915 = vmatprep.mubr.f32.mxu0 0.0
  %11916 = vmatmul.mubr.f32.gmra.mrb[0].mxu0 %v11541
  %v11917 = vpop.f32.mrb[0].mxu0
  %v11918 = vadd.f32 0.0, %v11917
  %v11919 = vpop.f32.mrb[0].mxu0
  %11920 = vmatprep.mubr.f32.mxu0 0.0
  %11921 = vmatmul.mubr.f32.gmra.mrb[0].mxu0 %v11544
  %v11922 = vpop.f32.mrb[0].mxu0
  %v11923 = vadd.f32 0.0, %v11922
  %v11924 = vpop.f32.mrb[0].mxu0
  %11925 = vmatprep.mubr.f32.mxu0 0.0
  %11926 = vmatmul.mubr.f32.gmra.mrb[0].mxu0 %v11547
  %v11927 = vpop.f32.mrb[0].mxu0
  %v11928 = vadd.f32 0.0, %v11927
  %v11929 = vpop.f32.mrb[0].mxu0
  %11930 = vmatprep.mubr.f32.mxu0 0.0
  %11931 = vmatmul.mubr.f32.gmra.mrb[0].mxu0 %v11550
  %v11932 = vpop.f32.mrb[0].mxu0
  %v11933 = vadd.f32 0.0, %v11932
  %v11934 = vpop.f32.mrb[0].mxu0
  %11935 = vmatprep.mubr.f32.mxu0 0.0
  %11936 = vmatmul.mubr.f32.gmra.mrb[0].mxu0 %v11553
  %v11937 = vpop.f32.mrb[0].mxu0
  %v11938 = vadd.f32 0.0, %v11937
  %v11939 = vpop.f32.mrb[0].mxu0
  %11940 = vmatprep.mubr.f32.mxu0 0.0
  %11941 = vmatmul.mubr.f32.gmra.mrb[0].mxu0 %v11556
  %v11942 = vpop.f32.mrb[0].mxu0
  %v11943 = vadd.f32 0.0, %v11942
  %v11944 = vpop.f32.mrb[0].mxu0
  %11945 = vdwg.mxu0
  %v11946 = vadd.f32 %v11236, %v11628
  %v11947 = vadd.f32 %v11237, %v11633
  %v11948 = vadd.f32 %v11238, %v11638
  %v11949 = vadd.f32 %v11239, %v11643
  %v11950 = vadd.f32 %v11240, %v11648
  %v11951 = vadd.f32 %v11241, %v11653
  %v11952 = vadd.f32 %v11242, %v11658
  %v11953 = vadd.f32 %v11243, %v11663
  %v11954 = vadd.f32 %v11244, %v11668
  %v11955 = vadd.f32 %v11245, %v11673
  %v11956 = vadd.f32 %v11246, %v11678
  %v11957 = vadd.f32 %v11247, %v11683
  %v11958 = vadd.f32 %v11248, %v11688
  %v11959 = vadd.f32 %v11249, %v11693
  %v11960 = vadd.f32 %v11250, %v11698
  %v11961 = vadd.f32 %v11251, %v11703
  %v11962 = vadd.f32 %v11252, %v11708
  %v11963 = vadd.f32 %v11253, %v11713
  %v11964 = vadd.f32 %v11254, %v11718
  %v11965 = vadd.f32 %v11255, %v11723
  %v11966 = vadd.f32 %v11256, %v11728
  %v11967 = vadd.f32 %v11257, %v11733
  %v11968 = vadd.f32 %v11258, %v11738
  %v11969 = vadd.f32 %v11259, %v11743
  %v11970 = vadd.f32 %v11260, %v11748
  %v11971 = vadd.f32 %v11261, %v11753
  %v11972 = vadd.f32 %v11262, %v11758
  %v11973 = vadd.f32 %v11263, %v11763
  %v11974 = vadd.f32 %v11264, %v11768
  %v11975 = vadd.f32 %v11265, %v11773
  %v11976 = vadd.f32 %v11266, %v11778
  %v11977 = vadd.f32 %v11267, %v11783
  %v11978 = vadd.f32 %v11268, %v11788
  %v11979 = vadd.f32 %v11269, %v11793
  %v11980 = vadd.f32 %v11270, %v11798
  %v11981 = vadd.f32 %v11271, %v11803
  %v11982 = vadd.f32 %v11272, %v11808
  %v11983 = vadd.f32 %v11273, %v11813
  %v11984 = vadd.f32 %v11274, %v11818
  %v11985 = vadd.f32 %v11275, %v11823
  %v11986 = vadd.f32 %v11276, %v11828
  %v11987 = vadd.f32 %v11277, %v11833
  %v11988 = vadd.f32 %v11278, %v11838
  %v11989 = vadd.f32 %v11279, %v11843
  %v11990 = vadd.f32 %v11280, %v11848
  %v11991 = vadd.f32 %v11281, %v11853
  %v11992 = vadd.f32 %v11282, %v11858
  %v11993 = vadd.f32 %v11283, %v11863
  %v11994 = vadd.f32 %v11284, %v11868
  %v11995 = vadd.f32 %v11285, %v11873
  %v11996 = vadd.f32 %v11286, %v11878
  %v11997 = vadd.f32 %v11287, %v11883
  %v11998 = vadd.f32 %v11288, %v11888
  %v11999 = vadd.f32 %v11289, %v11893
  %v12000 = vadd.f32 %v11290, %v11898
  %v12001 = vadd.f32 %v11291, %v11903
  %v12002 = vadd.f32 %v11292, %v11908
  %v12003 = vadd.f32 %v11293, %v11913
  %v12004 = vadd.f32 %v11294, %v11918
  %v12005 = vadd.f32 %v11295, %v11923
  %v12006 = vadd.f32 %v11296, %v11928
  %v12007 = vadd.f32 %v11297, %v11933
  %v12008 = vadd.f32 %v11298, %v11938
  %v12009 = vadd.f32 %v11299, %v11943
  %v12010 = vld [vmem:[%s4369 + $0x1] sm:$0xff]
  %v12011 = vld [vmem:[%s4369 + $0x9] sm:$0xff]
  %v12012 = vld [vmem:[%s4369 + $0x19] sm:$0xff]
  %v12013 = vld [vmem:[%s4369 + $0x21] sm:$0xff]
  %v12014 = vld [vmem:[%s4369 + $0x31] sm:$0xff]
  %v12015 = vld [vmem:[%s4369 + $0x39] sm:$0xff]
  %v12016 = vld [vmem:[%s4369 + $0x49] sm:$0xff]
  %v12017 = vld [vmem:[%s4369 + $0x51] sm:$0xff]
  %v12018 = vld [vmem:[%s4369 + $0x61] sm:$0xff]
  %v12019 = vld [vmem:[%s4369 + $0x69] sm:$0xff]
  %v12020 = vld [vmem:[%s4369 + $0x79] sm:$0xff]
  %v12021 = vld [vmem:[%s4369 + $0x81] sm:$0xff]
  %v12022 = vld [vmem:[%s4369 + $0x91] sm:$0xff]
  %v12023 = vld [vmem:[%s4369 + $0x99] sm:$0xff]
  %v12024 = vld [vmem:[%s4369 + $0xa9] sm:$0xff]
  %v12025 = vld [vmem:[%s4369 + $0xb1] sm:$0xff]
  %v12026 = vld [vmem:[%s4369 + $0xc1] sm:$0xff]
  %v12027 = vld [vmem:[%s4369 + $0xc9] sm:$0xff]
  %v12028 = vld [vmem:[%s4369 + $0xd9] sm:$0xff]
  %v12029 = vld [vmem:[%s4369 + $0xe1] sm:$0xff]
  %v12030 = vld [vmem:[%s4369 + $0xf1] sm:$0xff]
  %v12031 = vld [vmem:[%s4369 + $0xf9] sm:$0xff]
  %v12032 = vld [vmem:[%s4369 + $0x109] sm:$0xff]
  %v12033 = vld [vmem:[%s4369 + $0x111] sm:$0xff]
  %v12034 = vld [vmem:[%s4369 + $0x121] sm:$0xff]
  %v12035 = vld [vmem:[%s4369 + $0x129] sm:$0xff]
  %v12036 = vld [vmem:[%s4369 + $0x139] sm:$0xff]
  %v12037 = vld [vmem:[%s4369 + $0x141] sm:$0xff]
  %v12038 = vld [vmem:[%s4369 + $0x151] sm:$0xff]
  %v12039 = vld [vmem:[%s4369 + $0x159] sm:$0xff]
  %v12040 = vld [vmem:[%s4369 + $0x169] sm:$0xff]
  %v12041 = vld [vmem:[%s4369 + $0x171] sm:$0xff]
  %v12042 = vld [vmem:[%s4369 + $0x1b1] sm:$0xff]
  %v12043 = vld [vmem:[%s4369 + $0x1b9] sm:$0xff]
  %v12044 = vld [vmem:[%s4369 + $0x1c9] sm:$0xff]
  %v12045 = vld [vmem:[%s4369 + $0x1d1] sm:$0xff]
  %v12046 = vld [vmem:[%s4369 + $0x1e1] sm:$0xff]
  %v12047 = vld [vmem:[%s4369 + $0x1e9] sm:$0xff]
  %v12048 = vld [vmem:[%s4369 + $0x1f9] sm:$0xff]
  %v12049 = vld [vmem:[%s4369 + $0x201] sm:$0xff]
  %v12050 = vld [vmem:[%s4369 + $0x211] sm:$0xff]
  %v12051 = vld [vmem:[%s4369 + $0x219] sm:$0xff]
  %v12052 = vld [vmem:[%s4369 + $0x229] sm:$0xff]
  %v12053 = vld [vmem:[%s4369 + $0x231] sm:$0xff]
  %v12054 = vld [vmem:[%s4369 + $0x241] sm:$0xff]
  %v12055 = vld [vmem:[%s4369 + $0x249] sm:$0xff]
  %v12056 = vld [vmem:[%s4369 + $0x259] sm:$0xff]
  %v12057 = vld [vmem:[%s4369 + $0x261] sm:$0xff]
  %v12058 = vld [vmem:[%s4369 + $0x271] sm:$0xff]
  %v12059 = vld [vmem:[%s4369 + $0x279] sm:$0xff]
  %v12060 = vld [vmem:[%s4369 + $0x289] sm:$0xff]
  %v12061 = vld [vmem:[%s4369 + $0x291] sm:$0xff]
  %v12062 = vld [vmem:[%s4369 + $0x2a1] sm:$0xff]
  %v12063 = vld [vmem:[%s4369 + $0x2a9] sm:$0xff]
  %v12064 = vld [vmem:[%s4369 + $0x2b9] sm:$0xff]
  %v12065 = vld [vmem:[%s4369 + $0x2c1] sm:$0xff]
  %v12066 = vld [vmem:[%s4369 + $0x2d1] sm:$0xff]
  %v12067 = vld [vmem:[%s4369 + $0x2d9] sm:$0xff]
  %v12068 = vld [vmem:[%s4369 + $0x2e9] sm:$0xff]
  %v12069 = vld [vmem:[%s4369 + $0x2f1] sm:$0xff]
  %v12070 = vld [vmem:[%s4369 + $0x301] sm:$0xff]
  %v12071 = vld [vmem:[%s4369 + $0x309] sm:$0xff]
  %v12072 = vld [vmem:[%s4369 + $0x319] sm:$0xff]
  %v12073 = vld [vmem:[%s4369 + $0x321] sm:$0xff]
  %s12074 = scalar_lea.vmem %s2, 28
  %v12075 = vld [vmem:[%s12074] sm:$0xf]
  %v12077 = vsel %vm90, %v12010, 0
  %v12080 = vsel %vm90, %v12011, 0
  %v12083 = vsel %vm90, %v12012, 0
  %v12086 = vsel %vm90, %v12013, 0
  %v12089 = vsel %vm90, %v12014, 0
  %v12092 = vsel %vm90, %v12015, 0
  %v12095 = vsel %vm90, %v12016, 0
  %v12098 = vsel %vm90, %v12017, 0
  %v12101 = vsel %vm90, %v12018, 0
  %v12104 = vsel %vm90, %v12019, 0
  %v12107 = vsel %vm90, %v12020, 0
  %v12110 = vsel %vm90, %v12021, 0
  %v12113 = vsel %vm90, %v12022, 0
  %v12116 = vsel %vm90, %v12023, 0
  %v12119 = vsel %vm90, %v12024, 0
  %v12122 = vsel %vm90, %v12025, 0
  %v12125 = vsel %vm90, %v12026, 0
  %v12128 = vsel %vm90, %v12027, 0
  %v12131 = vsel %vm90, %v12028, 0
  %v12134 = vsel %vm90, %v12029, 0
  %v12137 = vsel %vm90, %v12030, 0
  %v12140 = vsel %vm90, %v12031, 0
  %v12143 = vsel %vm90, %v12032, 0
  %v12146 = vsel %vm90, %v12033, 0
  %v12149 = vsel %vm90, %v12034, 0
  %v12152 = vsel %vm90, %v12035, 0
  %v12155 = vsel %vm90, %v12036, 0
  %v12158 = vsel %vm90, %v12037, 0
  %v12161 = vsel %vm90, %v12038, 0
  %v12164 = vsel %vm90, %v12039, 0
  %v12167 = vsel %vm90, %v12040, 0
  %v12170 = vsel %vm90, %v12041, 0
  %v12173 = vsel %vm90, %v12042, 0
  %v12176 = vsel %vm90, %v12043, 0
  %v12179 = vsel %vm90, %v12044, 0
  %v12182 = vsel %vm90, %v12045, 0
  %v12185 = vsel %vm90, %v12046, 0
  %v12188 = vsel %vm90, %v12047, 0
  %v12191 = vsel %vm90, %v12048, 0
  %v12194 = vsel %vm90, %v12049, 0
  %v12197 = vsel %vm90, %v12050, 0
  %v12200 = vsel %vm90, %v12051, 0
  %v12203 = vsel %vm90, %v12052, 0
  %v12206 = vsel %vm90, %v12053, 0
  %v12209 = vsel %vm90, %v12054, 0
  %v12212 = vsel %vm90, %v12055, 0
  %v12215 = vsel %vm90, %v12056, 0
  %v12218 = vsel %vm90, %v12057, 0
  %v12221 = vsel %vm90, %v12058, 0
  %v12224 = vsel %vm90, %v12059, 0
  %v12227 = vsel %vm90, %v12060, 0
  %v12230 = vsel %vm90, %v12061, 0
  %v12233 = vsel %vm90, %v12062, 0
  %v12236 = vsel %vm90, %v12063, 0
  %v12239 = vsel %vm90, %v12064, 0
  %v12242 = vsel %vm90, %v12065, 0
  %v12245 = vsel %vm90, %v12066, 0
  %v12248 = vsel %vm90, %v12067, 0
  %v12251 = vsel %vm90, %v12068, 0
  %v12254 = vsel %vm90, %v12069, 0
  %v12257 = vsel %vm90, %v12070, 0
  %v12260 = vsel %vm90, %v12071, 0
  %v12263 = vsel %vm90, %v12072, 0
  %v12266 = vsel %vm90, %v12073, 0
  %v12269 = vsel %vm560, %v12075, 0
  %12271 = vmatprep.subr.mxu0 0.0
  %12272 = vmatpush1.msra.mxu0 %v12269
  %12273 = vmatprep.subr.mxu0 0.0
  %12274 = vmatpush1.msra.mxu0 0.0
  %12275 = vmatprep.subr.mxu0 0.0
  %12276 = vmatpush1.msra.mxu0 0.0
  %12277 = vmatprep.subr.mxu0 0.0
  %12278 = vmatpush1.msra.mxu0 0.0
  %12279 = vmatprep.subr.mxu0 0.0
  %12280 = vmatpush1.msra.mxu0 0.0
  %12281 = vmatprep.subr.mxu0 0.0
  %12282 = vmatpush1.msra.mxu0 0.0
  %12283 = vmatprep.subr.mxu0 0.0
  %12284 = vmatpush1.msra.mxu0 0.0
  %12285 = vmatprep.subr.mxu0 0.0
  %12286 = vmatpush1.msra.mxu0 0.0
  %12287 = vmatprep.subr.mxu0 0.0
  %12288 = vmatpush1.msra.mxu0 0.0
  %12289 = vmatprep.subr.mxu0 0.0
  %12290 = vmatpush1.msra.mxu0 0.0
  %12291 = vmatprep.subr.mxu0 0.0
  %12292 = vmatpush1.msra.mxu0 0.0
  %12293 = vmatprep.subr.mxu0 0.0
  %12294 = vmatpush1.msra.mxu0 0.0
  %12295 = vmatprep.subr.mxu0 0.0
  %12296 = vmatpush1.msra.mxu0 0.0
  %12297 = vmatprep.subr.mxu0 0.0
  %12298 = vmatpush1.msra.mxu0 0.0
  %12299 = vmatprep.subr.mxu0 0.0
  %12300 = vmatpush1.msra.mxu0 0.0
  %12301 = vmatprep.subr.mxu0 0.0
  %12302 = vmatpush1.msra.mxu0 0.0
  %12303 = vmatprep.subr.mxu0 0.0
  %12304 = vmatpush1.msra.mxu0 0.0
  %12305 = vmatprep.subr.mxu0 0.0
  %12306 = vmatpush1.msra.mxu0 0.0
  %12307 = vmatprep.subr.mxu0 0.0
  %12308 = vmatpush1.msra.mxu0 0.0
  %12309 = vmatprep.subr.mxu0 0.0
  %12310 = vmatpush1.msra.mxu0 0.0
  %12311 = vmatprep.subr.mxu0 0.0
  %12312 = vmatpush1.msra.mxu0 0.0
  %12313 = vmatprep.subr.mxu0 0.0
  %12314 = vmatpush1.msra.mxu0 0.0
  %12315 = vmatprep.subr.mxu0 0.0
  %12316 = vmatpush1.msra.mxu0 0.0
  %12317 = vmatprep.subr.mxu0 0.0
  %12318 = vmatpush1.msra.mxu0 0.0
  %12319 = vmatprep.subr.mxu0 0.0
  %12320 = vmatpush1.msra.mxu0 0.0
  %12321 = vmatprep.subr.mxu0 0.0
  %12322 = vmatpush1.msra.mxu0 0.0
  %12323 = vmatprep.subr.mxu0 0.0
  %12324 = vmatpush1.msra.mxu0 0.0
  %12325 = vmatprep.subr.mxu0 0.0
  %12326 = vmatpush1.msra.mxu0 0.0
  %12327 = vmatprep.subr.mxu0 0.0
  %12328 = vmatpush1.msra.mxu0 0.0
  %12329 = vmatprep.subr.mxu0 0.0
  %12330 = vmatpush1.msra.mxu0 0.0
  %12331 = vmatprep.subr.mxu0 0.0
  %12332 = vmatpush1.msra.mxu0 0.0
  %12333 = vmatprep.subr.mxu0 0.0
  %12334 = vmatpush1.msra.mxu0 0.0
  %12335 = vmatprep.mubr.f32.mxu0 0.0
  %12336 = vmatmul.mubr.f32.gmra.mrb[0].mxu0 %v12077
  %v12337 = vpop.f32.mrb[0].mxu0
  %v12338 = vadd.f32 0.0, %v12337
  %v12339 = vpop.f32.mrb[0].mxu0
  %12340 = vmatprep.mubr.f32.mxu0 0.0
  %12341 = vmatmul.mubr.f32.gmra.mrb[0].mxu0 %v12080
  %v12342 = vpop.f32.mrb[0].mxu0
  %v12343 = vadd.f32 0.0, %v12342
  %v12344 = vpop.f32.mrb[0].mxu0
  %12345 = vmatprep.mubr.f32.mxu0 0.0
  %12346 = vmatmul.mubr.f32.gmra.mrb[0].mxu0 %v12083
  %v12347 = vpop.f32.mrb[0].mxu0
  %v12348 = vadd.f32 0.0, %v12347
  %v12349 = vpop.f32.mrb[0].mxu0
  %12350 = vmatprep.mubr.f32.mxu0 0.0
  %12351 = vmatmul.mubr.f32.gmra.mrb[0].mxu0 %v12086
  %v12352 = vpop.f32.mrb[0].mxu0
  %v12353 = vadd.f32 0.0, %v12352
  %v12354 = vpop.f32.mrb[0].mxu0
  %12355 = vmatprep.mubr.f32.mxu0 0.0
  %12356 = vmatmul.mubr.f32.gmra.mrb[0].mxu0 %v12089
  %v12357 = vpop.f32.mrb[0].mxu0
  %v12358 = vadd.f32 0.0, %v12357
  %v12359 = vpop.f32.mrb[0].mxu0
  %12360 = vmatprep.mubr.f32.mxu0 0.0
  %12361 = vmatmul.mubr.f32.gmra.mrb[0].mxu0 %v12092
  %v12362 = vpop.f32.mrb[0].mxu0
  %v12363 = vadd.f32 0.0, %v12362
  %v12364 = vpop.f32.mrb[0].mxu0
  %12365 = vmatprep.mubr.f32.mxu0 0.0
  %12366 = vmatmul.mubr.f32.gmra.mrb[0].mxu0 %v12095
  %v12367 = vpop.f32.mrb[0].mxu0
  %v12368 = vadd.f32 0.0, %v12367
  %v12369 = vpop.f32.mrb[0].mxu0
  %12370 = vmatprep.mubr.f32.mxu0 0.0
  %12371 = vmatmul.mubr.f32.gmra.mrb[0].mxu0 %v12098
  %v12372 = vpop.f32.mrb[0].mxu0
  %v12373 = vadd.f32 0.0, %v12372
  %v12374 = vpop.f32.mrb[0].mxu0
  %12375 = vmatprep.mubr.f32.mxu0 0.0
  %12376 = vmatmul.mubr.f32.gmra.mrb[0].mxu0 %v12101
  %v12377 = vpop.f32.mrb[0].mxu0
  %v12378 = vadd.f32 0.0, %v12377
  %v12379 = vpop.f32.mrb[0].mxu0
  %12380 = vmatprep.mubr.f32.mxu0 0.0
  %12381 = vmatmul.mubr.f32.gmra.mrb[0].mxu0 %v12104
  %v12382 = vpop.f32.mrb[0].mxu0
  %v12383 = vadd.f32 0.0, %v12382
  %v12384 = vpop.f32.mrb[0].mxu0
  %12385 = vmatprep.mubr.f32.mxu0 0.0
  %12386 = vmatmul.mubr.f32.gmra.mrb[0].mxu0 %v12107
  %v12387 = vpop.f32.mrb[0].mxu0
  %v12388 = vadd.f32 0.0, %v12387
  %v12389 = vpop.f32.mrb[0].mxu0
  %12390 = vmatprep.mubr.f32.mxu0 0.0
  %12391 = vmatmul.mubr.f32.gmra.mrb[0].mxu0 %v12110
  %v12392 = vpop.f32.mrb[0].mxu0
  %v12393 = vadd.f32 0.0, %v12392
  %v12394 = vpop.f32.mrb[0].mxu0
  %12395 = vmatprep.mubr.f32.mxu0 0.0
  %12396 = vmatmul.mubr.f32.gmra.mrb[0].mxu0 %v12113
  %v12397 = vpop.f32.mrb[0].mxu0
  %v12398 = vadd.f32 0.0, %v12397
  %v12399 = vpop.f32.mrb[0].mxu0
  %12400 = vmatprep.mubr.f32.mxu0 0.0
  %12401 = vmatmul.mubr.f32.gmra.mrb[0].mxu0 %v12116
  %v12402 = vpop.f32.mrb[0].mxu0
  %v12403 = vadd.f32 0.0, %v12402
  %v12404 = vpop.f32.mrb[0].mxu0
  %12405 = vmatprep.mubr.f32.mxu0 0.0
  %12406 = vmatmul.mubr.f32.gmra.mrb[0].mxu0 %v12119
  %v12407 = vpop.f32.mrb[0].mxu0
  %v12408 = vadd.f32 0.0, %v12407
  %v12409 = vpop.f32.mrb[0].mxu0
  %12410 = vmatprep.mubr.f32.mxu0 0.0
  %12411 = vmatmul.mubr.f32.gmra.mrb[0].mxu0 %v12122
  %v12412 = vpop.f32.mrb[0].mxu0
  %v12413 = vadd.f32 0.0, %v12412
  %v12414 = vpop.f32.mrb[0].mxu0
  %12415 = vmatprep.mubr.f32.mxu0 0.0
  %12416 = vmatmul.mubr.f32.gmra.mrb[0].mxu0 %v12125
  %v12417 = vpop.f32.mrb[0].mxu0
  %v12418 = vadd.f32 0.0, %v12417
  %v12419 = vpop.f32.mrb[0].mxu0
  %12420 = vmatprep.mubr.f32.mxu0 0.0
  %12421 = vmatmul.mubr.f32.gmra.mrb[0].mxu0 %v12128
  %v12422 = vpop.f32.mrb[0].mxu0
  %v12423 = vadd.f32 0.0, %v12422
  %v12424 = vpop.f32.mrb[0].mxu0
  %12425 = vmatprep.mubr.f32.mxu0 0.0
  %12426 = vmatmul.mubr.f32.gmra.mrb[0].mxu0 %v12131
  %v12427 = vpop.f32.mrb[0].mxu0
  %v12428 = vadd.f32 0.0, %v12427
  %v12429 = vpop.f32.mrb[0].mxu0
  %12430 = vmatprep.mubr.f32.mxu0 0.0
  %12431 = vmatmul.mubr.f32.gmra.mrb[0].mxu0 %v12134
  %v12432 = vpop.f32.mrb[0].mxu0
  %v12433 = vadd.f32 0.0, %v12432
  %v12434 = vpop.f32.mrb[0].mxu0
  %12435 = vmatprep.mubr.f32.mxu0 0.0
  %12436 = vmatmul.mubr.f32.gmra.mrb[0].mxu0 %v12137
  %v12437 = vpop.f32.mrb[0].mxu0
  %v12438 = vadd.f32 0.0, %v12437
  %v12439 = vpop.f32.mrb[0].mxu0
  %12440 = vmatprep.mubr.f32.mxu0 0.0
  %12441 = vmatmul.mubr.f32.gmra.mrb[0].mxu0 %v12140
  %v12442 = vpop.f32.mrb[0].mxu0
  %v12443 = vadd.f32 0.0, %v12442
  %v12444 = vpop.f32.mrb[0].mxu0
  %12445 = vmatprep.mubr.f32.mxu0 0.0
  %12446 = vmatmul.mubr.f32.gmra.mrb[0].mxu0 %v12143
  %v12447 = vpop.f32.mrb[0].mxu0
  %v12448 = vadd.f32 0.0, %v12447
  %v12449 = vpop.f32.mrb[0].mxu0
  %12450 = vmatprep.mubr.f32.mxu0 0.0
  %12451 = vmatmul.mubr.f32.gmra.mrb[0].mxu0 %v12146
  %v12452 = vpop.f32.mrb[0].mxu0
  %v12453 = vadd.f32 0.0, %v12452
  %v12454 = vpop.f32.mrb[0].mxu0
  %12455 = vmatprep.mubr.f32.mxu0 0.0
  %12456 = vmatmul.mubr.f32.gmra.mrb[0].mxu0 %v12149
  %v12457 = vpop.f32.mrb[0].mxu0
  %v12458 = vadd.f32 0.0, %v12457
  %v12459 = vpop.f32.mrb[0].mxu0
  %12460 = vmatprep.mubr.f32.mxu0 0.0
  %12461 = vmatmul.mubr.f32.gmra.mrb[0].mxu0 %v12152
  %v12462 = vpop.f32.mrb[0].mxu0
  %v12463 = vadd.f32 0.0, %v12462
  %v12464 = vpop.f32.mrb[0].mxu0
  %12465 = vmatprep.mubr.f32.mxu0 0.0
  %12466 = vmatmul.mubr.f32.gmra.mrb[0].mxu0 %v12155
  %v12467 = vpop.f32.mrb[0].mxu0
  %v12468 = vadd.f32 0.0, %v12467
  %v12469 = vpop.f32.mrb[0].mxu0
  %12470 = vmatprep.mubr.f32.mxu0 0.0
  %12471 = vmatmul.mubr.f32.gmra.mrb[0].mxu0 %v12158
  %v12472 = vpop.f32.mrb[0].mxu0
  %v12473 = vadd.f32 0.0, %v12472
  %v12474 = vpop.f32.mrb[0].mxu0
  %12475 = vmatprep.mubr.f32.mxu0 0.0
  %12476 = vmatmul.mubr.f32.gmra.mrb[0].mxu0 %v12161
  %v12477 = vpop.f32.mrb[0].mxu0
  %v12478 = vadd.f32 0.0, %v12477
  %v12479 = vpop.f32.mrb[0].mxu0
  %12480 = vmatprep.mubr.f32.mxu0 0.0
  %12481 = vmatmul.mubr.f32.gmra.mrb[0].mxu0 %v12164
  %v12482 = vpop.f32.mrb[0].mxu0
  %v12483 = vadd.f32 0.0, %v12482
  %v12484 = vpop.f32.mrb[0].mxu0
  %12485 = vmatprep.mubr.f32.mxu0 0.0
  %12486 = vmatmul.mubr.f32.gmra.mrb[0].mxu0 %v12167
  %v12487 = vpop.f32.mrb[0].mxu0
  %v12488 = vadd.f32 0.0, %v12487
  %v12489 = vpop.f32.mrb[0].mxu0
  %12490 = vmatprep.mubr.f32.mxu0 0.0
  %12491 = vmatmul.mubr.f32.gmra.mrb[0].mxu0 %v12170
  %v12492 = vpop.f32.mrb[0].mxu0
  %v12493 = vadd.f32 0.0, %v12492
  %v12494 = vpop.f32.mrb[0].mxu0
  %12495 = vmatprep.mubr.f32.mxu0 0.0
  %12496 = vmatmul.mubr.f32.gmra.mrb[0].mxu0 %v12173
  %v12497 = vpop.f32.mrb[0].mxu0
  %v12498 = vadd.f32 0.0, %v12497
  %v12499 = vpop.f32.mrb[0].mxu0
  %12500 = vmatprep.mubr.f32.mxu0 0.0
  %12501 = vmatmul.mubr.f32.gmra.mrb[0].mxu0 %v12176
  %v12502 = vpop.f32.mrb[0].mxu0
  %v12503 = vadd.f32 0.0, %v12502
  %v12504 = vpop.f32.mrb[0].mxu0
  %12505 = vmatprep.mubr.f32.mxu0 0.0
  %12506 = vmatmul.mubr.f32.gmra.mrb[0].mxu0 %v12179
  %v12507 = vpop.f32.mrb[0].mxu0
  %v12508 = vadd.f32 0.0, %v12507
  %v12509 = vpop.f32.mrb[0].mxu0
  %12510 = vmatprep.mubr.f32.mxu0 0.0
  %12511 = vmatmul.mubr.f32.gmra.mrb[0].mxu0 %v12182
  %v12512 = vpop.f32.mrb[0].mxu0
  %v12513 = vadd.f32 0.0, %v12512
  %v12514 = vpop.f32.mrb[0].mxu0
  %12515 = vmatprep.mubr.f32.mxu0 0.0
  %12516 = vmatmul.mubr.f32.gmra.mrb[0].mxu0 %v12185
  %v12517 = vpop.f32.mrb[0].mxu0
  %v12518 = vadd.f32 0.0, %v12517
  %v12519 = vpop.f32.mrb[0].mxu0
  %12520 = vmatprep.mubr.f32.mxu0 0.0
  %12521 = vmatmul.mubr.f32.gmra.mrb[0].mxu0 %v12188
  %v12522 = vpop.f32.mrb[0].mxu0
  %v12523 = vadd.f32 0.0, %v12522
  %v12524 = vpop.f32.mrb[0].mxu0
  %12525 = vmatprep.mubr.f32.mxu0 0.0
  %12526 = vmatmul.mubr.f32.gmra.mrb[0].mxu0 %v12191
  %v12527 = vpop.f32.mrb[0].mxu0
  %v12528 = vadd.f32 0.0, %v12527
  %v12529 = vpop.f32.mrb[0].mxu0
  %12530 = vmatprep.mubr.f32.mxu0 0.0
  %12531 = vmatmul.mubr.f32.gmra.mrb[0].mxu0 %v12194
  %v12532 = vpop.f32.mrb[0].mxu0
  %v12533 = vadd.f32 0.0, %v12532
  %v12534 = vpop.f32.mrb[0].mxu0
  %12535 = vmatprep.mubr.f32.mxu0 0.0
  %12536 = vmatmul.mubr.f32.gmra.mrb[0].mxu0 %v12197
  %v12537 = vpop.f32.mrb[0].mxu0
  %v12538 = vadd.f32 0.0, %v12537
  %v12539 = vpop.f32.mrb[0].mxu0
  %12540 = vmatprep.mubr.f32.mxu0 0.0
  %12541 = vmatmul.mubr.f32.gmra.mrb[0].mxu0 %v12200
  %v12542 = vpop.f32.mrb[0].mxu0
  %v12543 = vadd.f32 0.0, %v12542
  %v12544 = vpop.f32.mrb[0].mxu0
  %12545 = vmatprep.mubr.f32.mxu0 0.0
  %12546 = vmatmul.mubr.f32.gmra.mrb[0].mxu0 %v12203
  %v12547 = vpop.f32.mrb[0].mxu0
  %v12548 = vadd.f32 0.0, %v12547
  %v12549 = vpop.f32.mrb[0].mxu0
  %12550 = vmatprep.mubr.f32.mxu0 0.0
  %12551 = vmatmul.mubr.f32.gmra.mrb[0].mxu0 %v12206
  %v12552 = vpop.f32.mrb[0].mxu0
  %v12553 = vadd.f32 0.0, %v12552
  %v12554 = vpop.f32.mrb[0].mxu0
  %12555 = vmatprep.mubr.f32.mxu0 0.0
  %12556 = vmatmul.mubr.f32.gmra.mrb[0].mxu0 %v12209
  %v12557 = vpop.f32.mrb[0].mxu0
  %v12558 = vadd.f32 0.0, %v12557
  %v12559 = vpop.f32.mrb[0].mxu0
  %12560 = vmatprep.mubr.f32.mxu0 0.0
  %12561 = vmatmul.mubr.f32.gmra.mrb[0].mxu0 %v12212
  %v12562 = vpop.f32.mrb[0].mxu0
  %v12563 = vadd.f32 0.0, %v12562
  %v12564 = vpop.f32.mrb[0].mxu0
  %12565 = vmatprep.mubr.f32.mxu0 0.0
  %12566 = vmatmul.mubr.f32.gmra.mrb[0].mxu0 %v12215
  %v12567 = vpop.f32.mrb[0].mxu0
  %v12568 = vadd.f32 0.0, %v12567
  %v12569 = vpop.f32.mrb[0].mxu0
  %12570 = vmatprep.mubr.f32.mxu0 0.0
  %12571 = vmatmul.mubr.f32.gmra.mrb[0].mxu0 %v12218
  %v12572 = vpop.f32.mrb[0].mxu0
  %v12573 = vadd.f32 0.0, %v12572
  %v12574 = vpop.f32.mrb[0].mxu0
  %12575 = vmatprep.mubr.f32.mxu0 0.0
  %12576 = vmatmul.mubr.f32.gmra.mrb[0].mxu0 %v12221
  %v12577 = vpop.f32.mrb[0].mxu0
  %v12578 = vadd.f32 0.0, %v12577
  %v12579 = vpop.f32.mrb[0].mxu0
  %12580 = vmatprep.mubr.f32.mxu0 0.0
  %12581 = vmatmul.mubr.f32.gmra.mrb[0].mxu0 %v12224
  %v12582 = vpop.f32.mrb[0].mxu0
  %v12583 = vadd.f32 0.0, %v12582
  %v12584 = vpop.f32.mrb[0].mxu0
  %12585 = vmatprep.mubr.f32.mxu0 0.0
  %12586 = vmatmul.mubr.f32.gmra.mrb[0].mxu0 %v12227
  %v12587 = vpop.f32.mrb[0].mxu0
  %v12588 = vadd.f32 0.0, %v12587
  %v12589 = vpop.f32.mrb[0].mxu0
  %12590 = vmatprep.mubr.f32.mxu0 0.0
  %12591 = vmatmul.mubr.f32.gmra.mrb[0].mxu0 %v12230
  %v12592 = vpop.f32.mrb[0].mxu0
  %v12593 = vadd.f32 0.0, %v12592
  %v12594 = vpop.f32.mrb[0].mxu0
  %12595 = vmatprep.mubr.f32.mxu0 0.0
  %12596 = vmatmul.mubr.f32.gmra.mrb[0].mxu0 %v12233
  %v12597 = vpop.f32.mrb[0].mxu0
  %v12598 = vadd.f32 0.0, %v12597
  %v12599 = vpop.f32.mrb[0].mxu0
  %12600 = vmatprep.mubr.f32.mxu0 0.0
  %12601 = vmatmul.mubr.f32.gmra.mrb[0].mxu0 %v12236
  %v12602 = vpop.f32.mrb[0].mxu0
  %v12603 = vadd.f32 0.0, %v12602
  %v12604 = vpop.f32.mrb[0].mxu0
  %12605 = vmatprep.mubr.f32.mxu0 0.0
  %12606 = vmatmul.mubr.f32.gmra.mrb[0].mxu0 %v12239
  %v12607 = vpop.f32.mrb[0].mxu0
  %v12608 = vadd.f32 0.0, %v12607
  %v12609 = vpop.f32.mrb[0].mxu0
  %12610 = vmatprep.mubr.f32.mxu0 0.0
  %12611 = vmatmul.mubr.f32.gmra.mrb[0].mxu0 %v12242
  %v12612 = vpop.f32.mrb[0].mxu0
  %v12613 = vadd.f32 0.0, %v12612
  %v12614 = vpop.f32.mrb[0].mxu0
  %12615 = vmatprep.mubr.f32.mxu0 0.0
  %12616 = vmatmul.mubr.f32.gmra.mrb[0].mxu0 %v12245
  %v12617 = vpop.f32.mrb[0].mxu0
  %v12618 = vadd.f32 0.0, %v12617
  %v12619 = vpop.f32.mrb[0].mxu0
  %12620 = vmatprep.mubr.f32.mxu0 0.0
  %12621 = vmatmul.mubr.f32.gmra.mrb[0].mxu0 %v12248
  %v12622 = vpop.f32.mrb[0].mxu0
  %v12623 = vadd.f32 0.0, %v12622
  %v12624 = vpop.f32.mrb[0].mxu0
  %12625 = vmatprep.mubr.f32.mxu0 0.0
  %12626 = vmatmul.mubr.f32.gmra.mrb[0].mxu0 %v12251
  %v12627 = vpop.f32.mrb[0].mxu0
  %v12628 = vadd.f32 0.0, %v12627
  %v12629 = vpop.f32.mrb[0].mxu0
  %12630 = vmatprep.mubr.f32.mxu0 0.0
  %12631 = vmatmul.mubr.f32.gmra.mrb[0].mxu0 %v12254
  %v12632 = vpop.f32.mrb[0].mxu0
  %v12633 = vadd.f32 0.0, %v12632
  %v12634 = vpop.f32.mrb[0].mxu0
  %12635 = vmatprep.mubr.f32.mxu0 0.0
  %12636 = vmatmul.mubr.f32.gmra.mrb[0].mxu0 %v12257
  %v12637 = vpop.f32.mrb[0].mxu0
  %v12638 = vadd.f32 0.0, %v12637
  %v12639 = vpop.f32.mrb[0].mxu0
  %12640 = vmatprep.mubr.f32.mxu0 0.0
  %12641 = vmatmul.mubr.f32.gmra.mrb[0].mxu0 %v12260
  %v12642 = vpop.f32.mrb[0].mxu0
  %v12643 = vadd.f32 0.0, %v12642
  %v12644 = vpop.f32.mrb[0].mxu0
  %12645 = vmatprep.mubr.f32.mxu0 0.0
  %12646 = vmatmul.mubr.f32.gmra.mrb[0].mxu0 %v12263
  %v12647 = vpop.f32.mrb[0].mxu0
  %v12648 = vadd.f32 0.0, %v12647
  %v12649 = vpop.f32.mrb[0].mxu0
  %12650 = vmatprep.mubr.f32.mxu0 0.0
  %12651 = vmatmul.mubr.f32.gmra.mrb[0].mxu0 %v12266
  %v12652 = vpop.f32.mrb[0].mxu0
  %v12653 = vadd.f32 0.0, %v12652
  %v12654 = vpop.f32.mrb[0].mxu0
  %12655 = vdwg.mxu0
  %v12656 = vadd.f32 %v11946, %v12338
  %v12657 = vadd.f32 %v11947, %v12343
  %v12658 = vadd.f32 %v11948, %v12348
  %v12659 = vadd.f32 %v11949, %v12353
  %v12660 = vadd.f32 %v11950, %v12358
  %v12661 = vadd.f32 %v11951, %v12363
  %v12662 = vadd.f32 %v11952, %v12368
  %v12663 = vadd.f32 %v11953, %v12373
  %v12664 = vadd.f32 %v11954, %v12378
  %v12665 = vadd.f32 %v11955, %v12383
  %v12666 = vadd.f32 %v11956, %v12388
  %v12667 = vadd.f32 %v11957, %v12393
  %v12668 = vadd.f32 %v11958, %v12398
  %v12669 = vadd.f32 %v11959, %v12403
  %v12670 = vadd.f32 %v11960, %v12408
  %v12671 = vadd.f32 %v11961, %v12413
  %v12672 = vadd.f32 %v11962, %v12418
  %v12673 = vadd.f32 %v11963, %v12423
  %v12674 = vadd.f32 %v11964, %v12428
  %v12675 = vadd.f32 %v11965, %v12433
  %v12676 = vadd.f32 %v11966, %v12438
  %v12677 = vadd.f32 %v11967, %v12443
  %v12678 = vadd.f32 %v11968, %v12448
  %v12679 = vadd.f32 %v11969, %v12453
  %v12680 = vadd.f32 %v11970, %v12458
  %v12681 = vadd.f32 %v11971, %v12463
  %v12682 = vadd.f32 %v11972, %v12468
  %v12683 = vadd.f32 %v11973, %v12473
  %v12684 = vadd.f32 %v11974, %v12478
  %v12685 = vadd.f32 %v11975, %v12483
  %v12686 = vadd.f32 %v11976, %v12488
  %v12687 = vadd.f32 %v11977, %v12493
  %v12688 = vadd.f32 %v11978, %v12498
  %v12689 = vadd.f32 %v11979, %v12503
  %v12690 = vadd.f32 %v11980, %v12508
  %v12691 = vadd.f32 %v11981, %v12513
  %v12692 = vadd.f32 %v11982, %v12518
  %v12693 = vadd.f32 %v11983, %v12523
  %v12694 = vadd.f32 %v11984, %v12528
  %v12695 = vadd.f32 %v11985, %v12533
  %v12696 = vadd.f32 %v11986, %v12538
  %v12697 = vadd.f32 %v11987, %v12543
  %v12698 = vadd.f32 %v11988, %v12548
  %v12699 = vadd.f32 %v11989, %v12553
  %v12700 = vadd.f32 %v11990, %v12558
  %v12701 = vadd.f32 %v11991, %v12563
  %v12702 = vadd.f32 %v11992, %v12568
  %v12703 = vadd.f32 %v11993, %v12573
  %v12704 = vadd.f32 %v11994, %v12578
  %v12705 = vadd.f32 %v11995, %v12583
  %v12706 = vadd.f32 %v11996, %v12588
  %v12707 = vadd.f32 %v11997, %v12593
  %v12708 = vadd.f32 %v11998, %v12598
  %v12709 = vadd.f32 %v11999, %v12603
  %v12710 = vadd.f32 %v12000, %v12608
  %v12711 = vadd.f32 %v12001, %v12613
  %v12712 = vadd.f32 %v12002, %v12618
  %v12713 = vadd.f32 %v12003, %v12623
  %v12714 = vadd.f32 %v12004, %v12628
  %v12715 = vadd.f32 %v12005, %v12633
  %v12716 = vadd.f32 %v12006, %v12638
  %v12717 = vadd.f32 %v12007, %v12643
  %v12718 = vadd.f32 %v12008, %v12648
  %v12719 = vadd.f32 %v12009, %v12653
  %v12720 = vld [vmem:[%s4369 + $0x2] sm:$0xff]
  %v12721 = vld [vmem:[%s4369 + $0xa] sm:$0xff]
  %v12722 = vld [vmem:[%s4369 + $0x1a] sm:$0xff]
  %v12723 = vld [vmem:[%s4369 + $0x22] sm:$0xff]
  %v12724 = vld [vmem:[%s4369 + $0x32] sm:$0xff]
  %v12725 = vld [vmem:[%s4369 + $0x3a] sm:$0xff]
  %v12726 = vld [vmem:[%s4369 + $0x4a] sm:$0xff]
  %v12727 = vld [vmem:[%s4369 + $0x52] sm:$0xff]
  %v12728 = vld [vmem:[%s4369 + $0x62] sm:$0xff]
  %v12729 = vld [vmem:[%s4369 + $0x6a] sm:$0xff]
  %v12730 = vld [vmem:[%s4369 + $0x7a] sm:$0xff]
  %v12731 = vld [vmem:[%s4369 + $0x82] sm:$0xff]
  %v12732 = vld [vmem:[%s4369 + $0x92] sm:$0xff]
  %v12733 = vld [vmem:[%s4369 + $0x9a] sm:$0xff]
  %v12734 = vld [vmem:[%s4369 + $0xaa] sm:$0xff]
  %v12735 = vld [vmem:[%s4369 + $0xb2] sm:$0xff]
  %v12736 = vld [vmem:[%s4369 + $0xc2] sm:$0xff]
  %v12737 = vld [vmem:[%s4369 + $0xca] sm:$0xff]
  %v12738 = vld [vmem:[%s4369 + $0xda] sm:$0xff]
  %v12739 = vld [vmem:[%s4369 + $0xe2] sm:$0xff]
  %v12740 = vld [vmem:[%s4369 + $0xf2] sm:$0xff]
  %v12741 = vld [vmem:[%s4369 + $0xfa] sm:$0xff]
  %v12742 = vld [vmem:[%s4369 + $0x10a] sm:$0xff]
  %v12743 = vld [vmem:[%s4369 + $0x112] sm:$0xff]
  %v12744 = vld [vmem:[%s4369 + $0x122] sm:$0xff]
  %v12745 = vld [vmem:[%s4369 + $0x12a] sm:$0xff]
  %v12746 = vld [vmem:[%s4369 + $0x13a] sm:$0xff]
  %v12747 = vld [vmem:[%s4369 + $0x142] sm:$0xff]
  %v12748 = vld [vmem:[%s4369 + $0x152] sm:$0xff]
  %v12749 = vld [vmem:[%s4369 + $0x15a] sm:$0xff]
  %v12750 = vld [vmem:[%s4369 + $0x16a] sm:$0xff]
  %v12751 = vld [vmem:[%s4369 + $0x172] sm:$0xff]
  %v12752 = vld [vmem:[%s4369 + $0x1b2] sm:$0xff]
  %v12753 = vld [vmem:[%s4369 + $0x1ba] sm:$0xff]
  %v12754 = vld [vmem:[%s4369 + $0x1ca] sm:$0xff]
  %v12755 = vld [vmem:[%s4369 + $0x1d2] sm:$0xff]
  %v12756 = vld [vmem:[%s4369 + $0x1e2] sm:$0xff]
  %v12757 = vld [vmem:[%s4369 + $0x1ea] sm:$0xff]
  %v12758 = vld [vmem:[%s4369 + $0x1fa] sm:$0xff]
  %v12759 = vld [vmem:[%s4369 + $0x202] sm:$0xff]
  %v12760 = vld [vmem:[%s4369 + $0x212] sm:$0xff]
  %v12761 = vld [vmem:[%s4369 + $0x21a] sm:$0xff]
  %v12762 = vld [vmem:[%s4369 + $0x22a] sm:$0xff]
  %v12763 = vld [vmem:[%s4369 + $0x232] sm:$0xff]
  %v12764 = vld [vmem:[%s4369 + $0x242] sm:$0xff]
  %v12765 = vld [vmem:[%s4369 + $0x24a] sm:$0xff]
  %v12766 = vld [vmem:[%s4369 + $0x25a] sm:$0xff]
  %v12767 = vld [vmem:[%s4369 + $0x262] sm:$0xff]
  %v12768 = vld [vmem:[%s4369 + $0x272] sm:$0xff]
  %v12769 = vld [vmem:[%s4369 + $0x27a] sm:$0xff]
  %v12770 = vld [vmem:[%s4369 + $0x28a] sm:$0xff]
  %v12771 = vld [vmem:[%s4369 + $0x292] sm:$0xff]
  %v12772 = vld [vmem:[%s4369 + $0x2a2] sm:$0xff]
  %v12773 = vld [vmem:[%s4369 + $0x2aa] sm:$0xff]
  %v12774 = vld [vmem:[%s4369 + $0x2ba] sm:$0xff]
  %v12775 = vld [vmem:[%s4369 + $0x2c2] sm:$0xff]
  %v12776 = vld [vmem:[%s4369 + $0x2d2] sm:$0xff]
  %v12777 = vld [vmem:[%s4369 + $0x2da] sm:$0xff]
  %v12778 = vld [vmem:[%s4369 + $0x2ea] sm:$0xff]
  %v12779 = vld [vmem:[%s4369 + $0x2f2] sm:$0xff]
  %v12780 = vld [vmem:[%s4369 + $0x302] sm:$0xff]
  %v12781 = vld [vmem:[%s4369 + $0x30a] sm:$0xff]
  %v12782 = vld [vmem:[%s4369 + $0x31a] sm:$0xff]
  %v12783 = vld [vmem:[%s4369 + $0x322] sm:$0xff]
  %s12784 = scalar_lea.vmem %s2, 32
  %v12785 = vld [vmem:[%s12784] sm:$0xf]
  %v12787 = vsel %vm90, %v12720, 0
  %v12790 = vsel %vm90, %v12721, 0
  %v12793 = vsel %vm90, %v12722, 0
  %v12796 = vsel %vm90, %v12723, 0
  %v12799 = vsel %vm90, %v12724, 0
  %v12802 = vsel %vm90, %v12725, 0
  %v12805 = vsel %vm90, %v12726, 0
  %v12808 = vsel %vm90, %v12727, 0
  %v12811 = vsel %vm90, %v12728, 0
  %v12814 = vsel %vm90, %v12729, 0
  %v12817 = vsel %vm90, %v12730, 0
  %v12820 = vsel %vm90, %v12731, 0
  %v12823 = vsel %vm90, %v12732, 0
  %v12826 = vsel %vm90, %v12733, 0
  %v12829 = vsel %vm90, %v12734, 0
  %v12832 = vsel %vm90, %v12735, 0
  %v12835 = vsel %vm90, %v12736, 0
  %v12838 = vsel %vm90, %v12737, 0
  %v12841 = vsel %vm90, %v12738, 0
  %v12844 = vsel %vm90, %v12739, 0
  %v12847 = vsel %vm90, %v12740, 0
  %v12850 = vsel %vm90, %v12741, 0
  %v12853 = vsel %vm90, %v12742, 0
  %v12856 = vsel %vm90, %v12743, 0
  %v12859 = vsel %vm90, %v12744, 0
  %v12862 = vsel %vm90, %v12745, 0
  %v12865 = vsel %vm90, %v12746, 0
  %v12868 = vsel %vm90, %v12747, 0
  %v12871 = vsel %vm90, %v12748, 0
  %v12874 = vsel %vm90, %v12749, 0
  %v12877 = vsel %vm90, %v12750, 0
  %v12880 = vsel %vm90, %v12751, 0
  %v12883 = vsel %vm90, %v12752, 0
  %v12886 = vsel %vm90, %v12753, 0
  %v12889 = vsel %vm90, %v12754, 0
  %v12892 = vsel %vm90, %v12755, 0
  %v12895 = vsel %vm90, %v12756, 0
  %v12898 = vsel %vm90, %v12757, 0
  %v12901 = vsel %vm90, %v12758, 0
  %v12904 = vsel %vm90, %v12759, 0
  %v12907 = vsel %vm90, %v12760, 0
  %v12910 = vsel %vm90, %v12761, 0
  %v12913 = vsel %vm90, %v12762, 0
  %v12916 = vsel %vm90, %v12763, 0
  %v12919 = vsel %vm90, %v12764, 0
  %v12922 = vsel %vm90, %v12765, 0
  %v12925 = vsel %vm90, %v12766, 0
  %v12928 = vsel %vm90, %v12767, 0
  %v12931 = vsel %vm90, %v12768, 0
  %v12934 = vsel %vm90, %v12769, 0
  %v12937 = vsel %vm90, %v12770, 0
  %v12940 = vsel %vm90, %v12771, 0
  %v12943 = vsel %vm90, %v12772, 0
  %v12946 = vsel %vm90, %v12773, 0
  %v12949 = vsel %vm90, %v12774, 0
  %v12952 = vsel %vm90, %v12775, 0
  %v12955 = vsel %vm90, %v12776, 0
  %v12958 = vsel %vm90, %v12777, 0
  %v12961 = vsel %vm90, %v12778, 0
  %v12964 = vsel %vm90, %v12779, 0
  %v12967 = vsel %vm90, %v12780, 0
  %v12970 = vsel %vm90, %v12781, 0
  %v12973 = vsel %vm90, %v12782, 0
  %v12976 = vsel %vm90, %v12783, 0
  %v12979 = vsel %vm560, %v12785, 0
  %12981 = vmatprep.subr.mxu0 0.0
  %12982 = vmatpush1.msra.mxu0 %v12979
  %12983 = vmatprep.subr.mxu0 0.0
  %12984 = vmatpush1.msra.mxu0 0.0
  %12985 = vmatprep.subr.mxu0 0.0
  %12986 = vmatpush1.msra.mxu0 0.0
  %12987 = vmatprep.subr.mxu0 0.0
  %12988 = vmatpush1.msra.mxu0 0.0
  %12989 = vmatprep.subr.mxu0 0.0
  %12990 = vmatpush1.msra.mxu0 0.0
  %12991 = vmatprep.subr.mxu0 0.0
  %12992 = vmatpush1.msra.mxu0 0.0
  %12993 = vmatprep.subr.mxu0 0.0
  %12994 = vmatpush1.msra.mxu0 0.0
  %12995 = vmatprep.subr.mxu0 0.0
  %12996 = vmatpush1.msra.mxu0 0.0
  %12997 = vmatprep.subr.mxu0 0.0
  %12998 = vmatpush1.msra.mxu0 0.0
  %12999 = vmatprep.subr.mxu0 0.0
  %13000 = vmatpush1.msra.mxu0 0.0
  %13001 = vmatprep.subr.mxu0 0.0
  %13002 = vmatpush1.msra.mxu0 0.0
  %13003 = vmatprep.subr.mxu0 0.0
  %13004 = vmatpush1.msra.mxu0 0.0
  %13005 = vmatprep.subr.mxu0 0.0
  %13006 = vmatpush1.msra.mxu0 0.0
  %13007 = vmatprep.subr.mxu0 0.0
  %13008 = vmatpush1.msra.mxu0 0.0
  %13009 = vmatprep.subr.mxu0 0.0
  %13010 = vmatpush1.msra.mxu0 0.0
  %13011 = vmatprep.subr.mxu0 0.0
  %13012 = vmatpush1.msra.mxu0 0.0
  %13013 = vmatprep.subr.mxu0 0.0
  %13014 = vmatpush1.msra.mxu0 0.0
  %13015 = vmatprep.subr.mxu0 0.0
  %13016 = vmatpush1.msra.mxu0 0.0
  %13017 = vmatprep.subr.mxu0 0.0
  %13018 = vmatpush1.msra.mxu0 0.0
  %13019 = vmatprep.subr.mxu0 0.0
  %13020 = vmatpush1.msra.mxu0 0.0
  %13021 = vmatprep.subr.mxu0 0.0
  %13022 = vmatpush1.msra.mxu0 0.0
  %13023 = vmatprep.subr.mxu0 0.0
  %13024 = vmatpush1.msra.mxu0 0.0
  %13025 = vmatprep.subr.mxu0 0.0
  %13026 = vmatpush1.msra.mxu0 0.0
  %13027 = vmatprep.subr.mxu0 0.0
  %13028 = vmatpush1.msra.mxu0 0.0
  %13029 = vmatprep.subr.mxu0 0.0
  %13030 = vmatpush1.msra.mxu0 0.0
  %13031 = vmatprep.subr.mxu0 0.0
  %13032 = vmatpush1.msra.mxu0 0.0
  %13033 = vmatprep.subr.mxu0 0.0
  %13034 = vmatpush1.msra.mxu0 0.0
  %13035 = vmatprep.subr.mxu0 0.0
  %13036 = vmatpush1.msra.mxu0 0.0
  %13037 = vmatprep.subr.mxu0 0.0
  %13038 = vmatpush1.msra.mxu0 0.0
  %13039 = vmatprep.subr.mxu0 0.0
  %13040 = vmatpush1.msra.mxu0 0.0
  %13041 = vmatprep.subr.mxu0 0.0
  %13042 = vmatpush1.msra.mxu0 0.0
  %13043 = vmatprep.subr.mxu0 0.0
  %13044 = vmatpush1.msra.mxu0 0.0
  %13045 = vmatprep.mubr.f32.mxu0 0.0
  %13046 = vmatmul.mubr.f32.gmra.mrb[0].mxu0 %v12787
  %v13047 = vpop.f32.mrb[0].mxu0
  %v13048 = vadd.f32 0.0, %v13047
  %v13049 = vpop.f32.mrb[0].mxu0
  %13050 = vmatprep.mubr.f32.mxu0 0.0
  %13051 = vmatmul.mubr.f32.gmra.mrb[0].mxu0 %v12790
  %v13052 = vpop.f32.mrb[0].mxu0
  %v13053 = vadd.f32 0.0, %v13052
  %v13054 = vpop.f32.mrb[0].mxu0
  %13055 = vmatprep.mubr.f32.mxu0 0.0
  %13056 = vmatmul.mubr.f32.gmra.mrb[0].mxu0 %v12793
  %v13057 = vpop.f32.mrb[0].mxu0
  %v13058 = vadd.f32 0.0, %v13057
  %v13059 = vpop.f32.mrb[0].mxu0
  %13060 = vmatprep.mubr.f32.mxu0 0.0
  %13061 = vmatmul.mubr.f32.gmra.mrb[0].mxu0 %v12796
  %v13062 = vpop.f32.mrb[0].mxu0
  %v13063 = vadd.f32 0.0, %v13062
  %v13064 = vpop.f32.mrb[0].mxu0
  %13065 = vmatprep.mubr.f32.mxu0 0.0
  %13066 = vmatmul.mubr.f32.gmra.mrb[0].mxu0 %v12799
  %v13067 = vpop.f32.mrb[0].mxu0
  %v13068 = vadd.f32 0.0, %v13067
  %v13069 = vpop.f32.mrb[0].mxu0
  %13070 = vmatprep.mubr.f32.mxu0 0.0
  %13071 = vmatmul.mubr.f32.gmra.mrb[0].mxu0 %v12802
  %v13072 = vpop.f32.mrb[0].mxu0
  %v13073 = vadd.f32 0.0, %v13072
  %v13074 = vpop.f32.mrb[0].mxu0
  %13075 = vmatprep.mubr.f32.mxu0 0.0
  %13076 = vmatmul.mubr.f32.gmra.mrb[0].mxu0 %v12805
  %v13077 = vpop.f32.mrb[0].mxu0
  %v13078 = vadd.f32 0.0, %v13077
  %v13079 = vpop.f32.mrb[0].mxu0
  %13080 = vmatprep.mubr.f32.mxu0 0.0
  %13081 = vmatmul.mubr.f32.gmra.mrb[0].mxu0 %v12808
  %v13082 = vpop.f32.mrb[0].mxu0
  %v13083 = vadd.f32 0.0, %v13082
  %v13084 = vpop.f32.mrb[0].mxu0
  %13085 = vmatprep.mubr.f32.mxu0 0.0
  %13086 = vmatmul.mubr.f32.gmra.mrb[0].mxu0 %v12811
  %v13087 = vpop.f32.mrb[0].mxu0
  %v13088 = vadd.f32 0.0, %v13087
  %v13089 = vpop.f32.mrb[0].mxu0
  %13090 = vmatprep.mubr.f32.mxu0 0.0
  %13091 = vmatmul.mubr.f32.gmra.mrb[0].mxu0 %v12814
  %v13092 = vpop.f32.mrb[0].mxu0
  %v13093 = vadd.f32 0.0, %v13092
  %v13094 = vpop.f32.mrb[0].mxu0
  %13095 = vmatprep.mubr.f32.mxu0 0.0
  %13096 = vmatmul.mubr.f32.gmra.mrb[0].mxu0 %v12817
  %v13097 = vpop.f32.mrb[0].mxu0
  %v13098 = vadd.f32 0.0, %v13097
  %v13099 = vpop.f32.mrb[0].mxu0
  %13100 = vmatprep.mubr.f32.mxu0 0.0
  %13101 = vmatmul.mubr.f32.gmra.mrb[0].mxu0 %v12820
  %v13102 = vpop.f32.mrb[0].mxu0
  %v13103 = vadd.f32 0.0, %v13102
  %v13104 = vpop.f32.mrb[0].mxu0
  %13105 = vmatprep.mubr.f32.mxu0 0.0
  %13106 = vmatmul.mubr.f32.gmra.mrb[0].mxu0 %v12823
  %v13107 = vpop.f32.mrb[0].mxu0
  %v13108 = vadd.f32 0.0, %v13107
  %v13109 = vpop.f32.mrb[0].mxu0
  %13110 = vmatprep.mubr.f32.mxu0 0.0
  %13111 = vmatmul.mubr.f32.gmra.mrb[0].mxu0 %v12826
  %v13112 = vpop.f32.mrb[0].mxu0
  %v13113 = vadd.f32 0.0, %v13112
  %v13114 = vpop.f32.mrb[0].mxu0
  %13115 = vmatprep.mubr.f32.mxu0 0.0
  %13116 = vmatmul.mubr.f32.gmra.mrb[0].mxu0 %v12829
  %v13117 = vpop.f32.mrb[0].mxu0
  %v13118 = vadd.f32 0.0, %v13117
  %v13119 = vpop.f32.mrb[0].mxu0
  %13120 = vmatprep.mubr.f32.mxu0 0.0
  %13121 = vmatmul.mubr.f32.gmra.mrb[0].mxu0 %v12832
  %v13122 = vpop.f32.mrb[0].mxu0
  %v13123 = vadd.f32 0.0, %v13122
  %v13124 = vpop.f32.mrb[0].mxu0
  %13125 = vmatprep.mubr.f32.mxu0 0.0
  %13126 = vmatmul.mubr.f32.gmra.mrb[0].mxu0 %v12835
  %v13127 = vpop.f32.mrb[0].mxu0
  %v13128 = vadd.f32 0.0, %v13127
  %v13129 = vpop.f32.mrb[0].mxu0
  %13130 = vmatprep.mubr.f32.mxu0 0.0
  %13131 = vmatmul.mubr.f32.gmra.mrb[0].mxu0 %v12838
  %v13132 = vpop.f32.mrb[0].mxu0
  %v13133 = vadd.f32 0.0, %v13132
  %v13134 = vpop.f32.mrb[0].mxu0
  %13135 = vmatprep.mubr.f32.mxu0 0.0
  %13136 = vmatmul.mubr.f32.gmra.mrb[0].mxu0 %v12841
  %v13137 = vpop.f32.mrb[0].mxu0
  %v13138 = vadd.f32 0.0, %v13137
  %v13139 = vpop.f32.mrb[0].mxu0
  %13140 = vmatprep.mubr.f32.mxu0 0.0
  %13141 = vmatmul.mubr.f32.gmra.mrb[0].mxu0 %v12844
  %v13142 = vpop.f32.mrb[0].mxu0
  %v13143 = vadd.f32 0.0, %v13142
  %v13144 = vpop.f32.mrb[0].mxu0
  %13145 = vmatprep.mubr.f32.mxu0 0.0
  %13146 = vmatmul.mubr.f32.gmra.mrb[0].mxu0 %v12847
  %v13147 = vpop.f32.mrb[0].mxu0
  %v13148 = vadd.f32 0.0, %v13147
  %v13149 = vpop.f32.mrb[0].mxu0
  %13150 = vmatprep.mubr.f32.mxu0 0.0
  %13151 = vmatmul.mubr.f32.gmra.mrb[0].mxu0 %v12850
  %v13152 = vpop.f32.mrb[0].mxu0
  %v13153 = vadd.f32 0.0, %v13152
  %v13154 = vpop.f32.mrb[0].mxu0
  %13155 = vmatprep.mubr.f32.mxu0 0.0
  %13156 = vmatmul.mubr.f32.gmra.mrb[0].mxu0 %v12853
  %v13157 = vpop.f32.mrb[0].mxu0
  %v13158 = vadd.f32 0.0, %v13157
  %v13159 = vpop.f32.mrb[0].mxu0
  %13160 = vmatprep.mubr.f32.mxu0 0.0
  %13161 = vmatmul.mubr.f32.gmra.mrb[0].mxu0 %v12856
  %v13162 = vpop.f32.mrb[0].mxu0
  %v13163 = vadd.f32 0.0, %v13162
  %v13164 = vpop.f32.mrb[0].mxu0
  %13165 = vmatprep.mubr.f32.mxu0 0.0
  %13166 = vmatmul.mubr.f32.gmra.mrb[0].mxu0 %v12859
  %v13167 = vpop.f32.mrb[0].mxu0
  %v13168 = vadd.f32 0.0, %v13167
  %v13169 = vpop.f32.mrb[0].mxu0
  %13170 = vmatprep.mubr.f32.mxu0 0.0
  %13171 = vmatmul.mubr.f32.gmra.mrb[0].mxu0 %v12862
  %v13172 = vpop.f32.mrb[0].mxu0
  %v13173 = vadd.f32 0.0, %v13172
  %v13174 = vpop.f32.mrb[0].mxu0
  %13175 = vmatprep.mubr.f32.mxu0 0.0
  %13176 = vmatmul.mubr.f32.gmra.mrb[0].mxu0 %v12865
  %v13177 = vpop.f32.mrb[0].mxu0
  %v13178 = vadd.f32 0.0, %v13177
  %v13179 = vpop.f32.mrb[0].mxu0
  %13180 = vmatprep.mubr.f32.mxu0 0.0
  %13181 = vmatmul.mubr.f32.gmra.mrb[0].mxu0 %v12868
  %v13182 = vpop.f32.mrb[0].mxu0
  %v13183 = vadd.f32 0.0, %v13182
  %v13184 = vpop.f32.mrb[0].mxu0
  %13185 = vmatprep.mubr.f32.mxu0 0.0
  %13186 = vmatmul.mubr.f32.gmra.mrb[0].mxu0 %v12871
  %v13187 = vpop.f32.mrb[0].mxu0
  %v13188 = vadd.f32 0.0, %v13187
  %v13189 = vpop.f32.mrb[0].mxu0
  %13190 = vmatprep.mubr.f32.mxu0 0.0
  %13191 = vmatmul.mubr.f32.gmra.mrb[0].mxu0 %v12874
  %v13192 = vpop.f32.mrb[0].mxu0
  %v13193 = vadd.f32 0.0, %v13192
  %v13194 = vpop.f32.mrb[0].mxu0
  %13195 = vmatprep.mubr.f32.mxu0 0.0
  %13196 = vmatmul.mubr.f32.gmra.mrb[0].mxu0 %v12877
  %v13197 = vpop.f32.mrb[0].mxu0
  %v13198 = vadd.f32 0.0, %v13197
  %v13199 = vpop.f32.mrb[0].mxu0
  %13200 = vmatprep.mubr.f32.mxu0 0.0
  %13201 = vmatmul.mubr.f32.gmra.mrb[0].mxu0 %v12880
  %v13202 = vpop.f32.mrb[0].mxu0
  %v13203 = vadd.f32 0.0, %v13202
  %v13204 = vpop.f32.mrb[0].mxu0
  %13205 = vmatprep.mubr.f32.mxu0 0.0
  %13206 = vmatmul.mubr.f32.gmra.mrb[0].mxu0 %v12883
  %v13207 = vpop.f32.mrb[0].mxu0
  %v13208 = vadd.f32 0.0, %v13207
  %v13209 = vpop.f32.mrb[0].mxu0
  %13210 = vmatprep.mubr.f32.mxu0 0.0
  %13211 = vmatmul.mubr.f32.gmra.mrb[0].mxu0 %v12886
  %v13212 = vpop.f32.mrb[0].mxu0
  %v13213 = vadd.f32 0.0, %v13212
  %v13214 = vpop.f32.mrb[0].mxu0
  %13215 = vmatprep.mubr.f32.mxu0 0.0
  %13216 = vmatmul.mubr.f32.gmra.mrb[0].mxu0 %v12889
  %v13217 = vpop.f32.mrb[0].mxu0
  %v13218 = vadd.f32 0.0, %v13217
  %v13219 = vpop.f32.mrb[0].mxu0
  %13220 = vmatprep.mubr.f32.mxu0 0.0
  %13221 = vmatmul.mubr.f32.gmra.mrb[0].mxu0 %v12892
  %v13222 = vpop.f32.mrb[0].mxu0
  %v13223 = vadd.f32 0.0, %v13222
  %v13224 = vpop.f32.mrb[0].mxu0
  %13225 = vmatprep.mubr.f32.mxu0 0.0
  %13226 = vmatmul.mubr.f32.gmra.mrb[0].mxu0 %v12895
  %v13227 = vpop.f32.mrb[0].mxu0
  %v13228 = vadd.f32 0.0, %v13227
  %v13229 = vpop.f32.mrb[0].mxu0
  %13230 = vmatprep.mubr.f32.mxu0 0.0
  %13231 = vmatmul.mubr.f32.gmra.mrb[0].mxu0 %v12898
  %v13232 = vpop.f32.mrb[0].mxu0
  %v13233 = vadd.f32 0.0, %v13232
  %v13234 = vpop.f32.mrb[0].mxu0
  %13235 = vmatprep.mubr.f32.mxu0 0.0
  %13236 = vmatmul.mubr.f32.gmra.mrb[0].mxu0 %v12901
  %v13237 = vpop.f32.mrb[0].mxu0
  %v13238 = vadd.f32 0.0, %v13237
  %v13239 = vpop.f32.mrb[0].mxu0
  %13240 = vmatprep.mubr.f32.mxu0 0.0
  %13241 = vmatmul.mubr.f32.gmra.mrb[0].mxu0 %v12904
  %v13242 = vpop.f32.mrb[0].mxu0
  %v13243 = vadd.f32 0.0, %v13242
  %v13244 = vpop.f32.mrb[0].mxu0
  %13245 = vmatprep.mubr.f32.mxu0 0.0
  %13246 = vmatmul.mubr.f32.gmra.mrb[0].mxu0 %v12907
  %v13247 = vpop.f32.mrb[0].mxu0
  %v13248 = vadd.f32 0.0, %v13247
  %v13249 = vpop.f32.mrb[0].mxu0
  %13250 = vmatprep.mubr.f32.mxu0 0.0
  %13251 = vmatmul.mubr.f32.gmra.mrb[0].mxu0 %v12910
  %v13252 = vpop.f32.mrb[0].mxu0
  %v13253 = vadd.f32 0.0, %v13252
  %v13254 = vpop.f32.mrb[0].mxu0
  %13255 = vmatprep.mubr.f32.mxu0 0.0
  %13256 = vmatmul.mubr.f32.gmra.mrb[0].mxu0 %v12913
  %v13257 = vpop.f32.mrb[0].mxu0
  %v13258 = vadd.f32 0.0, %v13257
  %v13259 = vpop.f32.mrb[0].mxu0
  %13260 = vmatprep.mubr.f32.mxu0 0.0
  %13261 = vmatmul.mubr.f32.gmra.mrb[0].mxu0 %v12916
  %v13262 = vpop.f32.mrb[0].mxu0
  %v13263 = vadd.f32 0.0, %v13262
  %v13264 = vpop.f32.mrb[0].mxu0
  %13265 = vmatprep.mubr.f32.mxu0 0.0
  %13266 = vmatmul.mubr.f32.gmra.mrb[0].mxu0 %v12919
  %v13267 = vpop.f32.mrb[0].mxu0
  %v13268 = vadd.f32 0.0, %v13267
  %v13269 = vpop.f32.mrb[0].mxu0
  %13270 = vmatprep.mubr.f32.mxu0 0.0
  %13271 = vmatmul.mubr.f32.gmra.mrb[0].mxu0 %v12922
  %v13272 = vpop.f32.mrb[0].mxu0
  %v13273 = vadd.f32 0.0, %v13272
  %v13274 = vpop.f32.mrb[0].mxu0
  %13275 = vmatprep.mubr.f32.mxu0 0.0
  %13276 = vmatmul.mubr.f32.gmra.mrb[0].mxu0 %v12925
  %v13277 = vpop.f32.mrb[0].mxu0
  %v13278 = vadd.f32 0.0, %v13277
  %v13279 = vpop.f32.mrb[0].mxu0
  %13280 = vmatprep.mubr.f32.mxu0 0.0
  %13281 = vmatmul.mubr.f32.gmra.mrb[0].mxu0 %v12928
  %v13282 = vpop.f32.mrb[0].mxu0
  %v13283 = vadd.f32 0.0, %v13282
  %v13284 = vpop.f32.mrb[0].mxu0
  %13285 = vmatprep.mubr.f32.mxu0 0.0
  %13286 = vmatmul.mubr.f32.gmra.mrb[0].mxu0 %v12931
  %v13287 = vpop.f32.mrb[0].mxu0
  %v13288 = vadd.f32 0.0, %v13287
  %v13289 = vpop.f32.mrb[0].mxu0
  %13290 = vmatprep.mubr.f32.mxu0 0.0
  %13291 = vmatmul.mubr.f32.gmra.mrb[0].mxu0 %v12934
  %v13292 = vpop.f32.mrb[0].mxu0
  %v13293 = vadd.f32 0.0, %v13292
  %v13294 = vpop.f32.mrb[0].mxu0
  %13295 = vmatprep.mubr.f32.mxu0 0.0
  %13296 = vmatmul.mubr.f32.gmra.mrb[0].mxu0 %v12937
  %v13297 = vpop.f32.mrb[0].mxu0
  %v13298 = vadd.f32 0.0, %v13297
  %v13299 = vpop.f32.mrb[0].mxu0
  %13300 = vmatprep.mubr.f32.mxu0 0.0
  %13301 = vmatmul.mubr.f32.gmra.mrb[0].mxu0 %v12940
  %v13302 = vpop.f32.mrb[0].mxu0
  %v13303 = vadd.f32 0.0, %v13302
  %v13304 = vpop.f32.mrb[0].mxu0
  %13305 = vmatprep.mubr.f32.mxu0 0.0
  %13306 = vmatmul.mubr.f32.gmra.mrb[0].mxu0 %v12943
  %v13307 = vpop.f32.mrb[0].mxu0
  %v13308 = vadd.f32 0.0, %v13307
  %v13309 = vpop.f32.mrb[0].mxu0
  %13310 = vmatprep.mubr.f32.mxu0 0.0
  %13311 = vmatmul.mubr.f32.gmra.mrb[0].mxu0 %v12946
  %v13312 = vpop.f32.mrb[0].mxu0
  %v13313 = vadd.f32 0.0, %v13312
  %v13314 = vpop.f32.mrb[0].mxu0
  %13315 = vmatprep.mubr.f32.mxu0 0.0
  %13316 = vmatmul.mubr.f32.gmra.mrb[0].mxu0 %v12949
  %v13317 = vpop.f32.mrb[0].mxu0
  %v13318 = vadd.f32 0.0, %v13317
  %v13319 = vpop.f32.mrb[0].mxu0
  %13320 = vmatprep.mubr.f32.mxu0 0.0
  %13321 = vmatmul.mubr.f32.gmra.mrb[0].mxu0 %v12952
  %v13322 = vpop.f32.mrb[0].mxu0
  %v13323 = vadd.f32 0.0, %v13322
  %v13324 = vpop.f32.mrb[0].mxu0
  %13325 = vmatprep.mubr.f32.mxu0 0.0
  %13326 = vmatmul.mubr.f32.gmra.mrb[0].mxu0 %v12955
  %v13327 = vpop.f32.mrb[0].mxu0
  %v13328 = vadd.f32 0.0, %v13327
  %v13329 = vpop.f32.mrb[0].mxu0
  %13330 = vmatprep.mubr.f32.mxu0 0.0
  %13331 = vmatmul.mubr.f32.gmra.mrb[0].mxu0 %v12958
  %v13332 = vpop.f32.mrb[0].mxu0
  %v13333 = vadd.f32 0.0, %v13332
  %v13334 = vpop.f32.mrb[0].mxu0
  %13335 = vmatprep.mubr.f32.mxu0 0.0
  %13336 = vmatmul.mubr.f32.gmra.mrb[0].mxu0 %v12961
  %v13337 = vpop.f32.mrb[0].mxu0
  %v13338 = vadd.f32 0.0, %v13337
  %v13339 = vpop.f32.mrb[0].mxu0
  %13340 = vmatprep.mubr.f32.mxu0 0.0
  %13341 = vmatmul.mubr.f32.gmra.mrb[0].mxu0 %v12964
  %v13342 = vpop.f32.mrb[0].mxu0
  %v13343 = vadd.f32 0.0, %v13342
  %v13344 = vpop.f32.mrb[0].mxu0
  %13345 = vmatprep.mubr.f32.mxu0 0.0
  %13346 = vmatmul.mubr.f32.gmra.mrb[0].mxu0 %v12967
  %v13347 = vpop.f32.mrb[0].mxu0
  %v13348 = vadd.f32 0.0, %v13347
  %v13349 = vpop.f32.mrb[0].mxu0
  %13350 = vmatprep.mubr.f32.mxu0 0.0
  %13351 = vmatmul.mubr.f32.gmra.mrb[0].mxu0 %v12970
  %v13352 = vpop.f32.mrb[0].mxu0
  %v13353 = vadd.f32 0.0, %v13352
  %v13354 = vpop.f32.mrb[0].mxu0
  %13355 = vmatprep.mubr.f32.mxu0 0.0
  %13356 = vmatmul.mubr.f32.gmra.mrb[0].mxu0 %v12973
  %v13357 = vpop.f32.mrb[0].mxu0
  %v13358 = vadd.f32 0.0, %v13357
  %v13359 = vpop.f32.mrb[0].mxu0
  %13360 = vmatprep.mubr.f32.mxu0 0.0
  %13361 = vmatmul.mubr.f32.gmra.mrb[0].mxu0 %v12976
  %v13362 = vpop.f32.mrb[0].mxu0
  %v13363 = vadd.f32 0.0, %v13362
  %v13364 = vpop.f32.mrb[0].mxu0
  %13365 = vdwg.mxu0
  %v13366 = vadd.f32 %v12656, %v13048
  %v13367 = vadd.f32 %v12657, %v13053
  %v13368 = vadd.f32 %v12658, %v13058
  %v13369 = vadd.f32 %v12659, %v13063
  %v13370 = vadd.f32 %v12660, %v13068
  %v13371 = vadd.f32 %v12661, %v13073
  %v13372 = vadd.f32 %v12662, %v13078
  %v13373 = vadd.f32 %v12663, %v13083
  %v13374 = vadd.f32 %v12664, %v13088
  %v13375 = vadd.f32 %v12665, %v13093
  %v13376 = vadd.f32 %v12666, %v13098
  %v13377 = vadd.f32 %v12667, %v13103
  %v13378 = vadd.f32 %v12668, %v13108
  %v13379 = vadd.f32 %v12669, %v13113
  %v13380 = vadd.f32 %v12670, %v13118
  %v13381 = vadd.f32 %v12671, %v13123
  %v13382 = vadd.f32 %v12672, %v13128
  %v13383 = vadd.f32 %v12673, %v13133
  %v13384 = vadd.f32 %v12674, %v13138
  %v13385 = vadd.f32 %v12675, %v13143
  %v13386 = vadd.f32 %v12676, %v13148
  %v13387 = vadd.f32 %v12677, %v13153
  %v13388 = vadd.f32 %v12678, %v13158
  %v13389 = vadd.f32 %v12679, %v13163
  %v13390 = vadd.f32 %v12680, %v13168
  %v13391 = vadd.f32 %v12681, %v13173
  %v13392 = vadd.f32 %v12682, %v13178
  %v13393 = vadd.f32 %v12683, %v13183
  %v13394 = vadd.f32 %v12684, %v13188
  %v13395 = vadd.f32 %v12685, %v13193
  %v13396 = vadd.f32 %v12686, %v13198
  %v13397 = vadd.f32 %v12687, %v13203
  %v13398 = vadd.f32 %v12688, %v13208
  %v13399 = vadd.f32 %v12689, %v13213
  %v13400 = vadd.f32 %v12690, %v13218
  %v13401 = vadd.f32 %v12691, %v13223
  %v13402 = vadd.f32 %v12692, %v13228
  %v13403 = vadd.f32 %v12693, %v13233
  %v13404 = vadd.f32 %v12694, %v13238
  %v13405 = vadd.f32 %v12695, %v13243
  %v13406 = vadd.f32 %v12696, %v13248
  %v13407 = vadd.f32 %v12697, %v13253
  %v13408 = vadd.f32 %v12698, %v13258
  %v13409 = vadd.f32 %v12699, %v13263
  %v13410 = vadd.f32 %v12700, %v13268
  %v13411 = vadd.f32 %v12701, %v13273
  %v13412 = vadd.f32 %v12702, %v13278
  %v13413 = vadd.f32 %v12703, %v13283
  %v13414 = vadd.f32 %v12704, %v13288
  %v13415 = vadd.f32 %v12705, %v13293
  %v13416 = vadd.f32 %v12706, %v13298
  %v13417 = vadd.f32 %v12707, %v13303
  %v13418 = vadd.f32 %v12708, %v13308
  %v13419 = vadd.f32 %v12709, %v13313
  %v13420 = vadd.f32 %v12710, %v13318
  %v13421 = vadd.f32 %v12711, %v13323
  %v13422 = vadd.f32 %v12712, %v13328
  %v13423 = vadd.f32 %v12713, %v13333
  %v13424 = vadd.f32 %v12714, %v13338
  %v13425 = vadd.f32 %v12715, %v13343
  %v13426 = vadd.f32 %v12716, %v13348
  %v13427 = vadd.f32 %v12717, %v13353
  %v13428 = vadd.f32 %v12718, %v13358
  %v13429 = vadd.f32 %v12719, %v13363
  %v13430 = vsel %vm90, %v13366, 0.0
  %v13431 = vsel %vm90, %v13367, 0.0
  %v13432 = vadd.f32 %v13430, %v13431
  %v13433 = vsel %vm90, %v13368, 0.0
  %v13434 = vadd.f32 %v13432, %v13433
  %v13435 = vsel %vm90, %v13369, 0.0
  %v13436 = vadd.f32 %v13434, %v13435
  %v13437 = vsel %vm90, %v13370, 0.0
  %v13438 = vadd.f32 %v13436, %v13437
  %v13439 = vsel %vm90, %v13371, 0.0
  %v13440 = vadd.f32 %v13438, %v13439
  %v13441 = vsel %vm90, %v13372, 0.0
  %v13442 = vadd.f32 %v13440, %v13441
  %v13443 = vsel %vm90, %v13373, 0.0
  %v13444 = vadd.f32 %v13442, %v13443
  %v13445 = vsel %vm90, %v13374, 0.0
  %v13446 = vadd.f32 %v13444, %v13445
  %v13447 = vsel %vm90, %v13375, 0.0
  %v13448 = vadd.f32 %v13446, %v13447
  %v13449 = vsel %vm90, %v13376, 0.0
  %v13450 = vadd.f32 %v13448, %v13449
  %v13451 = vsel %vm90, %v13377, 0.0
  %v13452 = vadd.f32 %v13450, %v13451
  %v13453 = vsel %vm90, %v13378, 0.0
  %v13454 = vadd.f32 %v13452, %v13453
  %v13455 = vsel %vm90, %v13379, 0.0
  %v13456 = vadd.f32 %v13454, %v13455
  %v13457 = vsel %vm90, %v13380, 0.0
  %v13458 = vadd.f32 %v13456, %v13457
  %v13459 = vsel %vm90, %v13381, 0.0
  %v13460 = vadd.f32 %v13458, %v13459
  %v13461 = vsel %vm90, %v13382, 0.0
  %v13462 = vadd.f32 %v13460, %v13461
  %v13463 = vsel %vm90, %v13383, 0.0
  %v13464 = vadd.f32 %v13462, %v13463
  %v13465 = vsel %vm90, %v13384, 0.0
  %v13466 = vadd.f32 %v13464, %v13465
  %v13467 = vsel %vm90, %v13385, 0.0
  %v13468 = vadd.f32 %v13466, %v13467
  %v13469 = vsel %vm90, %v13386, 0.0
  %v13470 = vadd.f32 %v13468, %v13469
  %v13471 = vsel %vm90, %v13387, 0.0
  %v13472 = vadd.f32 %v13470, %v13471
  %v13473 = vsel %vm90, %v13388, 0.0
  %v13474 = vadd.f32 %v13472, %v13473
  %v13475 = vsel %vm90, %v13389, 0.0
  %v13476 = vadd.f32 %v13474, %v13475
  %v13477 = vsel %vm90, %v13390, 0.0
  %v13478 = vadd.f32 %v13476, %v13477
  %v13479 = vsel %vm90, %v13391, 0.0
  %v13480 = vadd.f32 %v13478, %v13479
  %v13481 = vsel %vm90, %v13392, 0.0
  %v13482 = vadd.f32 %v13480, %v13481
  %v13483 = vsel %vm90, %v13393, 0.0
  %v13484 = vadd.f32 %v13482, %v13483
  %v13485 = vsel %vm90, %v13394, 0.0
  %v13486 = vadd.f32 %v13484, %v13485
  %v13487 = vsel %vm90, %v13395, 0.0
  %v13488 = vadd.f32 %v13486, %v13487
  %v13489 = vsel %vm90, %v13396, 0.0
  %v13490 = vadd.f32 %v13488, %v13489
  %v13491 = vsel %vm90, %v13397, 0.0
  %v13492 = vadd.f32 %v13490, %v13491
  %v13493 = vsel %vm90, %v13398, 0.0
  %v13494 = vadd.f32 %v13492, %v13493
  %v13495 = vsel %vm90, %v13399, 0.0
  %v13496 = vadd.f32 %v13494, %v13495
  %v13497 = vsel %vm90, %v13400, 0.0
  %v13498 = vadd.f32 %v13496, %v13497
  %v13499 = vsel %vm90, %v13401, 0.0
  %v13500 = vadd.f32 %v13498, %v13499
  %v13501 = vsel %vm90, %v13402, 0.0
  %v13502 = vadd.f32 %v13500, %v13501
  %v13503 = vsel %vm90, %v13403, 0.0
  %v13504 = vadd.f32 %v13502, %v13503
  %v13505 = vsel %vm90, %v13404, 0.0
  %v13506 = vadd.f32 %v13504, %v13505
  %v13507 = vsel %vm90, %v13405, 0.0
  %v13508 = vadd.f32 %v13506, %v13507
  %v13509 = vsel %vm90, %v13406, 0.0
  %v13510 = vadd.f32 %v13508, %v13509
  %v13511 = vsel %vm90, %v13407, 0.0
  %v13512 = vadd.f32 %v13510, %v13511
  %v13513 = vsel %vm90, %v13408, 0.0
  %v13514 = vadd.f32 %v13512, %v13513
  %v13515 = vsel %vm90, %v13409, 0.0
  %v13516 = vadd.f32 %v13514, %v13515
  %v13517 = vsel %vm90, %v13410, 0.0
  %v13518 = vadd.f32 %v13516, %v13517
  %v13519 = vsel %vm90, %v13411, 0.0
  %v13520 = vadd.f32 %v13518, %v13519
  %v13521 = vsel %vm90, %v13412, 0.0
  %v13522 = vadd.f32 %v13520, %v13521
  %v13523 = vsel %vm90, %v13413, 0.0
  %v13524 = vadd.f32 %v13522, %v13523
  %v13525 = vsel %vm90, %v13414, 0.0
  %v13526 = vadd.f32 %v13524, %v13525
  %v13527 = vsel %vm90, %v13415, 0.0
  %v13528 = vadd.f32 %v13526, %v13527
  %v13529 = vsel %vm90, %v13416, 0.0
  %v13530 = vadd.f32 %v13528, %v13529
  %v13531 = vsel %vm90, %v13417, 0.0
  %v13532 = vadd.f32 %v13530, %v13531
  %v13533 = vsel %vm90, %v13418, 0.0
  %v13534 = vadd.f32 %v13532, %v13533
  %v13535 = vsel %vm90, %v13419, 0.0
  %v13536 = vadd.f32 %v13534, %v13535
  %v13537 = vsel %vm90, %v13420, 0.0
  %v13538 = vadd.f32 %v13536, %v13537
  %v13539 = vsel %vm90, %v13421, 0.0
  %v13540 = vadd.f32 %v13538, %v13539
  %v13541 = vsel %vm90, %v13422, 0.0
  %v13542 = vadd.f32 %v13540, %v13541
  %v13543 = vsel %vm90, %v13423, 0.0
  %v13544 = vadd.f32 %v13542, %v13543
  %v13545 = vsel %vm90, %v13424, 0.0
  %v13546 = vadd.f32 %v13544, %v13545
  %v13547 = vsel %vm90, %v13425, 0.0
  %v13548 = vadd.f32 %v13546, %v13547
  %v13549 = vsel %vm90, %v13426, 0.0
  %v13550 = vadd.f32 %v13548, %v13549
  %v13551 = vsel %vm90, %v13427, 0.0
  %v13552 = vadd.f32 %v13550, %v13551
  %v13553 = vsel %vm90, %v13428, 0.0
  %v13554 = vadd.f32 %v13552, %v13553
  %v13555 = vsel %vm90, %v13429, 0.0
  %v13556 = vadd.f32 %v13554, %v13555
  %v13557 = vrot.slane %v13556, 4
  %v13558 = vadd.f32 %v13556, %v13557
  %v13559 = vrot.slane %v13558, 2
  %v13560 = vadd.f32 %v13558, %v13559
  %v13561 = vrot.slane %v13560, 1
  %v13562 = vadd.f32 %v13560, %v13561
  %v13563 = vmul.f32 %v13562, 0.001953125
  %v13564 = vsub.f32 %v13366, %v13563
  %v13565 = vsub.f32 %v13367, %v13563
  %v13566 = vsub.f32 %v13368, %v13563
  %v13567 = vsub.f32 %v13369, %v13563
  %v13568 = vsub.f32 %v13370, %v13563
  %v13569 = vsub.f32 %v13371, %v13563
  %v13570 = vsub.f32 %v13372, %v13563
  %v13571 = vsub.f32 %v13373, %v13563
  %v13572 = vsub.f32 %v13374, %v13563
  %v13573 = vsub.f32 %v13375, %v13563
  %v13574 = vsub.f32 %v13376, %v13563
  %v13575 = vsub.f32 %v13377, %v13563
  %v13576 = vsub.f32 %v13378, %v13563
  %v13577 = vsub.f32 %v13379, %v13563
  %v13578 = vsub.f32 %v13380, %v13563
  %v13579 = vsub.f32 %v13381, %v13563
  %v13580 = vsub.f32 %v13382, %v13563
  %v13581 = vsub.f32 %v13383, %v13563
  %v13582 = vsub.f32 %v13384, %v13563
  %v13583 = vsub.f32 %v13385, %v13563
  %v13584 = vsub.f32 %v13386, %v13563
  %v13585 = vsub.f32 %v13387, %v13563
  %v13586 = vsub.f32 %v13388, %v13563
  %v13587 = vsub.f32 %v13389, %v13563
  %v13588 = vsub.f32 %v13390, %v13563
  %v13589 = vsub.f32 %v13391, %v13563
  %v13590 = vsub.f32 %v13392, %v13563
  %v13591 = vsub.f32 %v13393, %v13563
  %v13592 = vsub.f32 %v13394, %v13563
  %v13593 = vsub.f32 %v13395, %v13563
  %v13594 = vsub.f32 %v13396, %v13563
  %v13595 = vsub.f32 %v13397, %v13563
  %v13596 = vsub.f32 %v13398, %v13563
  %v13597 = vsub.f32 %v13399, %v13563
  %v13598 = vsub.f32 %v13400, %v13563
  %v13599 = vsub.f32 %v13401, %v13563
  %v13600 = vsub.f32 %v13402, %v13563
  %v13601 = vsub.f32 %v13403, %v13563
  %v13602 = vsub.f32 %v13404, %v13563
  %v13603 = vsub.f32 %v13405, %v13563
  %v13604 = vsub.f32 %v13406, %v13563
  %v13605 = vsub.f32 %v13407, %v13563
  %v13606 = vsub.f32 %v13408, %v13563
  %v13607 = vsub.f32 %v13409, %v13563
  %v13608 = vsub.f32 %v13410, %v13563
  %v13609 = vsub.f32 %v13411, %v13563
  %v13610 = vsub.f32 %v13412, %v13563
  %v13611 = vsub.f32 %v13413, %v13563
  %v13612 = vsub.f32 %v13414, %v13563
  %v13613 = vsub.f32 %v13415, %v13563
  %v13614 = vsub.f32 %v13416, %v13563
  %v13615 = vsub.f32 %v13417, %v13563
  %v13616 = vsub.f32 %v13418, %v13563
  %v13617 = vsub.f32 %v13419, %v13563
  %v13618 = vsub.f32 %v13420, %v13563
  %v13619 = vsub.f32 %v13421, %v13563
  %v13620 = vsub.f32 %v13422, %v13563
  %v13621 = vsub.f32 %v13423, %v13563
  %v13622 = vsub.f32 %v13424, %v13563
  %v13623 = vsub.f32 %v13425, %v13563
  %v13624 = vsub.f32 %v13426, %v13563
  %v13625 = vsub.f32 %v13427, %v13563
  %v13626 = vsub.f32 %v13428, %v13563
  %v13627 = vsub.f32 %v13429, %v13563
  %v13628 = vmul.f32 %v13564, %v13564
  %v13629 = vmul.f32 %v13565, %v13565
  %v13630 = vmul.f32 %v13566, %v13566
  %v13631 = vmul.f32 %v13567, %v13567
  %v13632 = vmul.f32 %v13568, %v13568
  %v13633 = vmul.f32 %v13569, %v13569
  %v13634 = vmul.f32 %v13570, %v13570
  %v13635 = vmul.f32 %v13571, %v13571
  %v13636 = vmul.f32 %v13572, %v13572
  %v13637 = vmul.f32 %v13573, %v13573
  %v13638 = vmul.f32 %v13574, %v13574
  %v13639 = vmul.f32 %v13575, %v13575
  %v13640 = vmul.f32 %v13576, %v13576
  %v13641 = vmul.f32 %v13577, %v13577
  %v13642 = vmul.f32 %v13578, %v13578
  %v13643 = vmul.f32 %v13579, %v13579
  %v13644 = vmul.f32 %v13580, %v13580
  %v13645 = vmul.f32 %v13581, %v13581
  %v13646 = vmul.f32 %v13582, %v13582
  %v13647 = vmul.f32 %v13583, %v13583
  %v13648 = vmul.f32 %v13584, %v13584
  %v13649 = vmul.f32 %v13585, %v13585
  %v13650 = vmul.f32 %v13586, %v13586
  %v13651 = vmul.f32 %v13587, %v13587
  %v13652 = vmul.f32 %v13588, %v13588
  %v13653 = vmul.f32 %v13589, %v13589
  %v13654 = vmul.f32 %v13590, %v13590
  %v13655 = vmul.f32 %v13591, %v13591
  %v13656 = vmul.f32 %v13592, %v13592
  %v13657 = vmul.f32 %v13593, %v13593
  %v13658 = vmul.f32 %v13594, %v13594
  %v13659 = vmul.f32 %v13595, %v13595
  %v13660 = vmul.f32 %v13596, %v13596
  %v13661 = vmul.f32 %v13597, %v13597
  %v13662 = vmul.f32 %v13598, %v13598
  %v13663 = vmul.f32 %v13599, %v13599
  %v13664 = vmul.f32 %v13600, %v13600
  %v13665 = vmul.f32 %v13601, %v13601
  %v13666 = vmul.f32 %v13602, %v13602
  %v13667 = vmul.f32 %v13603, %v13603
  %v13668 = vmul.f32 %v13604, %v13604
  %v13669 = vmul.f32 %v13605, %v13605
  %v13670 = vmul.f32 %v13606, %v13606
  %v13671 = vmul.f32 %v13607, %v13607
  %v13672 = vmul.f32 %v13608, %v13608
  %v13673 = vmul.f32 %v13609, %v13609
  %v13674 = vmul.f32 %v13610, %v13610
  %v13675 = vmul.f32 %v13611, %v13611
  %v13676 = vmul.f32 %v13612, %v13612
  %v13677 = vmul.f32 %v13613, %v13613
  %v13678 = vmul.f32 %v13614, %v13614
  %v13679 = vmul.f32 %v13615, %v13615
  %v13680 = vmul.f32 %v13616, %v13616
  %v13681 = vmul.f32 %v13617, %v13617
  %v13682 = vmul.f32 %v13618, %v13618
  %v13683 = vmul.f32 %v13619, %v13619
  %v13684 = vmul.f32 %v13620, %v13620
  %v13685 = vmul.f32 %v13621, %v13621
  %v13686 = vmul.f32 %v13622, %v13622
  %v13687 = vmul.f32 %v13623, %v13623
  %v13688 = vmul.f32 %v13624, %v13624
  %v13689 = vmul.f32 %v13625, %v13625
  %v13690 = vmul.f32 %v13626, %v13626
  %v13691 = vmul.f32 %v13627, %v13627
  %v13692 = vsel %vm90, %v13628, 0.0
  %v13693 = vsel %vm90, %v13629, 0.0
  %v13694 = vadd.f32 %v13692, %v13693
  %v13695 = vsel %vm90, %v13630, 0.0
  %v13696 = vadd.f32 %v13694, %v13695
  %v13697 = vsel %vm90, %v13631, 0.0
  %v13698 = vadd.f32 %v13696, %v13697
  %v13699 = vsel %vm90, %v13632, 0.0
  %v13700 = vadd.f32 %v13698, %v13699
  %v13701 = vsel %vm90, %v13633, 0.0
  %v13702 = vadd.f32 %v13700, %v13701
  %v13703 = vsel %vm90, %v13634, 0.0
  %v13704 = vadd.f32 %v13702, %v13703
  %v13705 = vsel %vm90, %v13635, 0.0
  %v13706 = vadd.f32 %v13704, %v13705
  %v13707 = vsel %vm90, %v13636, 0.0
  %v13708 = vadd.f32 %v13706, %v13707
  %v13709 = vsel %vm90, %v13637, 0.0
  %v13710 = vadd.f32 %v13708, %v13709
  %v13711 = vsel %vm90, %v13638, 0.0
  %v13712 = vadd.f32 %v13710, %v13711
  %v13713 = vsel %vm90, %v13639, 0.0
  %v13714 = vadd.f32 %v13712, %v13713
  %v13715 = vsel %vm90, %v13640, 0.0
  %v13716 = vadd.f32 %v13714, %v13715
  %v13717 = vsel %vm90, %v13641, 0.0
  %v13718 = vadd.f32 %v13716, %v13717
  %v13719 = vsel %vm90, %v13642, 0.0
  %v13720 = vadd.f32 %v13718, %v13719
  %v13721 = vsel %vm90, %v13643, 0.0
  %v13722 = vadd.f32 %v13720, %v13721
  %v13723 = vsel %vm90, %v13644, 0.0
  %v13724 = vadd.f32 %v13722, %v13723
  %v13725 = vsel %vm90, %v13645, 0.0
  %v13726 = vadd.f32 %v13724, %v13725
  %v13727 = vsel %vm90, %v13646, 0.0
  %v13728 = vadd.f32 %v13726, %v13727
  %v13729 = vsel %vm90, %v13647, 0.0
  %v13730 = vadd.f32 %v13728, %v13729
  %v13731 = vsel %vm90, %v13648, 0.0
  %v13732 = vadd.f32 %v13730, %v13731
  %v13733 = vsel %vm90, %v13649, 0.0
  %v13734 = vadd.f32 %v13732, %v13733
  %v13735 = vsel %vm90, %v13650, 0.0
  %v13736 = vadd.f32 %v13734, %v13735
  %v13737 = vsel %vm90, %v13651, 0.0
  %v13738 = vadd.f32 %v13736, %v13737
  %v13739 = vsel %vm90, %v13652, 0.0
  %v13740 = vadd.f32 %v13738, %v13739
  %v13741 = vsel %vm90, %v13653, 0.0
  %v13742 = vadd.f32 %v13740, %v13741
  %v13743 = vsel %vm90, %v13654, 0.0
  %v13744 = vadd.f32 %v13742, %v13743
  %v13745 = vsel %vm90, %v13655, 0.0
  %v13746 = vadd.f32 %v13744, %v13745
  %v13747 = vsel %vm90, %v13656, 0.0
  %v13748 = vadd.f32 %v13746, %v13747
  %v13749 = vsel %vm90, %v13657, 0.0
  %v13750 = vadd.f32 %v13748, %v13749
  %v13751 = vsel %vm90, %v13658, 0.0
  %v13752 = vadd.f32 %v13750, %v13751
  %v13753 = vsel %vm90, %v13659, 0.0
  %v13754 = vadd.f32 %v13752, %v13753
  %v13755 = vsel %vm90, %v13660, 0.0
  %v13756 = vadd.f32 %v13754, %v13755
  %v13757 = vsel %vm90, %v13661, 0.0
  %v13758 = vadd.f32 %v13756, %v13757
  %v13759 = vsel %vm90, %v13662, 0.0
  %v13760 = vadd.f32 %v13758, %v13759
  %v13761 = vsel %vm90, %v13663, 0.0
  %v13762 = vadd.f32 %v13760, %v13761
  %v13763 = vsel %vm90, %v13664, 0.0
  %v13764 = vadd.f32 %v13762, %v13763
  %v13765 = vsel %vm90, %v13665, 0.0
  %v13766 = vadd.f32 %v13764, %v13765
  %v13767 = vsel %vm90, %v13666, 0.0
  %v13768 = vadd.f32 %v13766, %v13767
  %v13769 = vsel %vm90, %v13667, 0.0
  %v13770 = vadd.f32 %v13768, %v13769
  %v13771 = vsel %vm90, %v13668, 0.0
  %v13772 = vadd.f32 %v13770, %v13771
  %v13773 = vsel %vm90, %v13669, 0.0
  %v13774 = vadd.f32 %v13772, %v13773
  %v13775 = vsel %vm90, %v13670, 0.0
  %v13776 = vadd.f32 %v13774, %v13775
  %v13777 = vsel %vm90, %v13671, 0.0
  %v13778 = vadd.f32 %v13776, %v13777
  %v13779 = vsel %vm90, %v13672, 0.0
  %v13780 = vadd.f32 %v13778, %v13779
  %v13781 = vsel %vm90, %v13673, 0.0
  %v13782 = vadd.f32 %v13780, %v13781
  %v13783 = vsel %vm90, %v13674, 0.0
  %v13784 = vadd.f32 %v13782, %v13783
  %v13785 = vsel %vm90, %v13675, 0.0
  %v13786 = vadd.f32 %v13784, %v13785
  %v13787 = vsel %vm90, %v13676, 0.0
  %v13788 = vadd.f32 %v13786, %v13787
  %v13789 = vsel %vm90, %v13677, 0.0
  %v13790 = vadd.f32 %v13788, %v13789
  %v13791 = vsel %vm90, %v13678, 0.0
  %v13792 = vadd.f32 %v13790, %v13791
  %v13793 = vsel %vm90, %v13679, 0.0
  %v13794 = vadd.f32 %v13792, %v13793
  %v13795 = vsel %vm90, %v13680, 0.0
  %v13796 = vadd.f32 %v13794, %v13795
  %v13797 = vsel %vm90, %v13681, 0.0
  %v13798 = vadd.f32 %v13796, %v13797
  %v13799 = vsel %vm90, %v13682, 0.0
  %v13800 = vadd.f32 %v13798, %v13799
  %v13801 = vsel %vm90, %v13683, 0.0
  %v13802 = vadd.f32 %v13800, %v13801
  %v13803 = vsel %vm90, %v13684, 0.0
  %v13804 = vadd.f32 %v13802, %v13803
  %v13805 = vsel %vm90, %v13685, 0.0
  %v13806 = vadd.f32 %v13804, %v13805
  %v13807 = vsel %vm90, %v13686, 0.0
  %v13808 = vadd.f32 %v13806, %v13807
  %v13809 = vsel %vm90, %v13687, 0.0
  %v13810 = vadd.f32 %v13808, %v13809
  %v13811 = vsel %vm90, %v13688, 0.0
  %v13812 = vadd.f32 %v13810, %v13811
  %v13813 = vsel %vm90, %v13689, 0.0
  %v13814 = vadd.f32 %v13812, %v13813
  %v13815 = vsel %vm90, %v13690, 0.0
  %v13816 = vadd.f32 %v13814, %v13815
  %v13817 = vsel %vm90, %v13691, 0.0
  %v13818 = vadd.f32 %v13816, %v13817
  %v13819 = vrot.slane %v13818, 4
  %v13820 = vadd.f32 %v13818, %v13819
  %v13821 = vrot.slane %v13820, 2
  %v13822 = vadd.f32 %v13820, %v13821
  %v13823 = vrot.slane %v13822, 1
  %v13824 = vadd.f32 %v13822, %v13823
  %v13825 = vmul.f32 %v13824, 0.001953125
  %v13826 = vadd.f32 %v13825, 1e-05
  %v13827 = vrsqrt.pop %v13826
  %v13828 = vmul.f32 %v7167, %v13827
  %v13830 = vlaneseq
  %v13831 = vshrl.u32 %v13830, 7
  %v13832 = vsub.s32 0, %v13831
  %v13833 = vrot.slane %v13828, %v13832
  %v13835 = vmul.f32 %v13564, %v13833
  %v13836 = vmul.f32 %v13565, %v13833
  %v13837 = vmul.f32 %v13566, %v13833
  %v13838 = vmul.f32 %v13567, %v13833
  %v13839 = vmul.f32 %v13568, %v13833
  %v13840 = vmul.f32 %v13569, %v13833
  %v13841 = vmul.f32 %v13570, %v13833
  %v13842 = vmul.f32 %v13571, %v13833
  %v13843 = vmul.f32 %v13572, %v13833
  %v13844 = vmul.f32 %v13573, %v13833
  %v13845 = vmul.f32 %v13574, %v13833
  %v13846 = vmul.f32 %v13575, %v13833
  %v13847 = vmul.f32 %v13576, %v13833
  %v13848 = vmul.f32 %v13577, %v13833
  %v13849 = vmul.f32 %v13578, %v13833
  %v13850 = vmul.f32 %v13579, %v13833
  %v13851 = vmul.f32 %v13580, %v13833
  %v13852 = vmul.f32 %v13581, %v13833
  %v13853 = vmul.f32 %v13582, %v13833
  %v13854 = vmul.f32 %v13583, %v13833
  %v13855 = vmul.f32 %v13584, %v13833
  %v13856 = vmul.f32 %v13585, %v13833
  %v13857 = vmul.f32 %v13586, %v13833
  %v13858 = vmul.f32 %v13587, %v13833
  %v13859 = vmul.f32 %v13588, %v13833
  %v13860 = vmul.f32 %v13589, %v13833
  %v13861 = vmul.f32 %v13590, %v13833
  %v13862 = vmul.f32 %v13591, %v13833
  %v13863 = vmul.f32 %v13592, %v13833
  %v13864 = vmul.f32 %v13593, %v13833
  %v13865 = vmul.f32 %v13594, %v13833
  %v13866 = vmul.f32 %v13595, %v13833
  %v13867 = vmul.f32 %v13596, %v13833
  %v13868 = vmul.f32 %v13597, %v13833
  %v13869 = vmul.f32 %v13598, %v13833
  %v13870 = vmul.f32 %v13599, %v13833
  %v13871 = vmul.f32 %v13600, %v13833
  %v13872 = vmul.f32 %v13601, %v13833
  %v13873 = vmul.f32 %v13602, %v13833
  %v13874 = vmul.f32 %v13603, %v13833
  %v13875 = vmul.f32 %v13604, %v13833
  %v13876 = vmul.f32 %v13605, %v13833
  %v13877 = vmul.f32 %v13606, %v13833
  %v13878 = vmul.f32 %v13607, %v13833
  %v13879 = vmul.f32 %v13608, %v13833
  %v13880 = vmul.f32 %v13609, %v13833
  %v13881 = vmul.f32 %v13610, %v13833
  %v13882 = vmul.f32 %v13611, %v13833
  %v13883 = vmul.f32 %v13612, %v13833
  %v13884 = vmul.f32 %v13613, %v13833
  %v13885 = vmul.f32 %v13614, %v13833
  %v13886 = vmul.f32 %v13615, %v13833
  %v13887 = vmul.f32 %v13616, %v13833
  %v13888 = vmul.f32 %v13617, %v13833
  %v13889 = vmul.f32 %v13618, %v13833
  %v13890 = vmul.f32 %v13619, %v13833
  %v13891 = vmul.f32 %v13620, %v13833
  %v13892 = vmul.f32 %v13621, %v13833
  %v13893 = vmul.f32 %v13622, %v13833
  %v13894 = vmul.f32 %v13623, %v13833
  %v13895 = vmul.f32 %v13624, %v13833
  %v13896 = vmul.f32 %v13625, %v13833
  %v13897 = vmul.f32 %v13626, %v13833
  %v13898 = vmul.f32 %v13627, %v13833
  %v13900 = vlaneseq
  %v13901 = vshrl.u32 %v13900, 7
  %v13902 = vsub.s32 0, %v13901
  %v13903 = vrot.slane %v7168, %v13902
  %v13905 = vadd.f32 %v13835, %v13903
  %v13906 = vadd.f32 %v13836, %v13903
  %v13907 = vadd.f32 %v13837, %v13903
  %v13908 = vadd.f32 %v13838, %v13903
  %v13909 = vadd.f32 %v13839, %v13903
  %v13910 = vadd.f32 %v13840, %v13903
  %v13911 = vadd.f32 %v13841, %v13903
  %v13912 = vadd.f32 %v13842, %v13903
  %v13913 = vadd.f32 %v13843, %v13903
  %v13914 = vadd.f32 %v13844, %v13903
  %v13915 = vadd.f32 %v13845, %v13903
  %v13916 = vadd.f32 %v13846, %v13903
  %v13917 = vadd.f32 %v13847, %v13903
  %v13918 = vadd.f32 %v13848, %v13903
  %v13919 = vadd.f32 %v13849, %v13903
  %v13920 = vadd.f32 %v13850, %v13903
  %v13921 = vadd.f32 %v13851, %v13903
  %v13922 = vadd.f32 %v13852, %v13903
  %v13923 = vadd.f32 %v13853, %v13903
  %v13924 = vadd.f32 %v13854, %v13903
  %v13925 = vadd.f32 %v13855, %v13903
  %v13926 = vadd.f32 %v13856, %v13903
  %v13927 = vadd.f32 %v13857, %v13903
  %v13928 = vadd.f32 %v13858, %v13903
  %v13929 = vadd.f32 %v13859, %v13903
  %v13930 = vadd.f32 %v13860, %v13903
  %v13931 = vadd.f32 %v13861, %v13903
  %v13932 = vadd.f32 %v13862, %v13903
  %v13933 = vadd.f32 %v13863, %v13903
  %v13934 = vadd.f32 %v13864, %v13903
  %v13935 = vadd.f32 %v13865, %v13903
  %v13936 = vadd.f32 %v13866, %v13903
  %v13937 = vadd.f32 %v13867, %v13903
  %v13938 = vadd.f32 %v13868, %v13903
  %v13939 = vadd.f32 %v13869, %v13903
  %v13940 = vadd.f32 %v13870, %v13903
  %v13941 = vadd.f32 %v13871, %v13903
  %v13942 = vadd.f32 %v13872, %v13903
  %v13943 = vadd.f32 %v13873, %v13903
  %v13944 = vadd.f32 %v13874, %v13903
  %v13945 = vadd.f32 %v13875, %v13903
  %v13946 = vadd.f32 %v13876, %v13903
  %v13947 = vadd.f32 %v13877, %v13903
  %v13948 = vadd.f32 %v13878, %v13903
  %v13949 = vadd.f32 %v13879, %v13903
  %v13950 = vadd.f32 %v13880, %v13903
  %v13951 = vadd.f32 %v13881, %v13903
  %v13952 = vadd.f32 %v13882, %v13903
  %v13953 = vadd.f32 %v13883, %v13903
  %v13954 = vadd.f32 %v13884, %v13903
  %v13955 = vadd.f32 %v13885, %v13903
  %v13956 = vadd.f32 %v13886, %v13903
  %v13957 = vadd.f32 %v13887, %v13903
  %v13958 = vadd.f32 %v13888, %v13903
  %v13959 = vadd.f32 %v13889, %v13903
  %v13960 = vadd.f32 %v13890, %v13903
  %v13961 = vadd.f32 %v13891, %v13903
  %v13962 = vadd.f32 %v13892, %v13903
  %v13963 = vadd.f32 %v13893, %v13903
  %v13964 = vadd.f32 %v13894, %v13903
  %v13965 = vadd.f32 %v13895, %v13903
  %v13966 = vadd.f32 %v13896, %v13903
  %v13967 = vadd.f32 %v13897, %v13903
  %v13968 = vadd.f32 %v13898, %v13903
  %v13969 = vadd.f32 %v13905, %v26
  %v13970 = vadd.f32 %v13906, %v27
  %v13971 = vadd.f32 %v13907, %v28
  %v13972 = vadd.f32 %v13908, %v29
  %v13973 = vadd.f32 %v13909, %v30
  %v13974 = vadd.f32 %v13910, %v31
  %v13975 = vadd.f32 %v13911, %v32
  %v13976 = vadd.f32 %v13912, %v33
  %v13977 = vadd.f32 %v13913, %v34
  %v13978 = vadd.f32 %v13914, %v35
  %v13979 = vadd.f32 %v13915, %v36
  %v13980 = vadd.f32 %v13916, %v37
  %v13981 = vadd.f32 %v13917, %v38
  %v13982 = vadd.f32 %v13918, %v39
  %v13983 = vadd.f32 %v13919, %v40
  %v13984 = vadd.f32 %v13920, %v41
  %v13985 = vadd.f32 %v13921, %v42
  %v13986 = vadd.f32 %v13922, %v43
  %v13987 = vadd.f32 %v13923, %v44
  %v13988 = vadd.f32 %v13924, %v45
  %v13989 = vadd.f32 %v13925, %v46
  %v13990 = vadd.f32 %v13926, %v47
  %v13991 = vadd.f32 %v13927, %v48
  %v13992 = vadd.f32 %v13928, %v49
  %v13993 = vadd.f32 %v13929, %v50
  %v13994 = vadd.f32 %v13930, %v51
  %v13995 = vadd.f32 %v13931, %v52
  %v13996 = vadd.f32 %v13932, %v53
  %v13997 = vadd.f32 %v13933, %v54
  %v13998 = vadd.f32 %v13934, %v55
  %v13999 = vadd.f32 %v13935, %v56
  %v14000 = vadd.f32 %v13936, %v57
  %v14001 = vadd.f32 %v13937, %v58
  %v14002 = vadd.f32 %v13938, %v59
  %v14003 = vadd.f32 %v13939, %v60
  %v14004 = vadd.f32 %v13940, %v61
  %v14005 = vadd.f32 %v13941, %v62
  %v14006 = vadd.f32 %v13942, %v63
  %v14007 = vadd.f32 %v13943, %v64
  %v14008 = vadd.f32 %v13944, %v65
  %v14009 = vadd.f32 %v13945, %v66
  %v14010 = vadd.f32 %v13946, %v67
  %v14011 = vadd.f32 %v13947, %v68
  %v14012 = vadd.f32 %v13948, %v69
  %v14013 = vadd.f32 %v13949, %v70
  %v14014 = vadd.f32 %v13950, %v71
  %v14015 = vadd.f32 %v13951, %v72
  %v14016 = vadd.f32 %v13952, %v73
  %v14017 = vadd.f32 %v13953, %v74
  %v14018 = vadd.f32 %v13954, %v75
  %v14019 = vadd.f32 %v13955, %v76
  %v14020 = vadd.f32 %v13956, %v77
  %v14021 = vadd.f32 %v13957, %v78
  %v14022 = vadd.f32 %v13958, %v79
  %v14023 = vadd.f32 %v13959, %v80
  %v14024 = vadd.f32 %v13960, %v81
  %v14025 = vadd.f32 %v13961, %v82
  %v14026 = vadd.f32 %v13962, %v83
  %v14027 = vadd.f32 %v13963, %v84
  %v14028 = vadd.f32 %v13964, %v85
  %v14029 = vadd.f32 %v13965, %v86
  %v14030 = vadd.f32 %v13966, %v87
  %v14031 = vadd.f32 %v13967, %v88
  %v14032 = vadd.f32 %v13968, %v89
  %v14033 = vmax.f32 %v13969, 0.0
  %v14034 = vmax.f32 %v13970, 0.0
  %v14035 = vmax.f32 %v13971, 0.0
  %v14036 = vmax.f32 %v13972, 0.0
  %v14037 = vmax.f32 %v13973, 0.0
  %v14038 = vmax.f32 %v13974, 0.0
  %v14039 = vmax.f32 %v13975, 0.0
  %v14040 = vmax.f32 %v13976, 0.0
  %v14041 = vmax.f32 %v13977, 0.0
  %v14042 = vmax.f32 %v13978, 0.0
  %v14043 = vmax.f32 %v13979, 0.0
  %v14044 = vmax.f32 %v13980, 0.0
  %v14045 = vmax.f32 %v13981, 0.0
  %v14046 = vmax.f32 %v13982, 0.0
  %v14047 = vmax.f32 %v13983, 0.0
  %v14048 = vmax.f32 %v13984, 0.0
  %v14049 = vmax.f32 %v13985, 0.0
  %v14050 = vmax.f32 %v13986, 0.0
  %v14051 = vmax.f32 %v13987, 0.0
  %v14052 = vmax.f32 %v13988, 0.0
  %v14053 = vmax.f32 %v13989, 0.0
  %v14054 = vmax.f32 %v13990, 0.0
  %v14055 = vmax.f32 %v13991, 0.0
  %v14056 = vmax.f32 %v13992, 0.0
  %v14057 = vmax.f32 %v13993, 0.0
  %v14058 = vmax.f32 %v13994, 0.0
  %v14059 = vmax.f32 %v13995, 0.0
  %v14060 = vmax.f32 %v13996, 0.0
  %v14061 = vmax.f32 %v13997, 0.0
  %v14062 = vmax.f32 %v13998, 0.0
  %v14063 = vmax.f32 %v13999, 0.0
  %v14064 = vmax.f32 %v14000, 0.0
  %v14065 = vmax.f32 %v14001, 0.0
  %v14066 = vmax.f32 %v14002, 0.0
  %v14067 = vmax.f32 %v14003, 0.0
  %v14068 = vmax.f32 %v14004, 0.0
  %v14069 = vmax.f32 %v14005, 0.0
  %v14070 = vmax.f32 %v14006, 0.0
  %v14071 = vmax.f32 %v14007, 0.0
  %v14072 = vmax.f32 %v14008, 0.0
  %v14073 = vmax.f32 %v14009, 0.0
  %v14074 = vmax.f32 %v14010, 0.0
  %v14075 = vmax.f32 %v14011, 0.0
  %v14076 = vmax.f32 %v14012, 0.0
  %v14077 = vmax.f32 %v14013, 0.0
  %v14078 = vmax.f32 %v14014, 0.0
  %v14079 = vmax.f32 %v14015, 0.0
  %v14080 = vmax.f32 %v14016, 0.0
  %v14081 = vmax.f32 %v14017, 0.0
  %v14082 = vmax.f32 %v14018, 0.0
  %v14083 = vmax.f32 %v14019, 0.0
  %v14084 = vmax.f32 %v14020, 0.0
  %v14085 = vmax.f32 %v14021, 0.0
  %v14086 = vmax.f32 %v14022, 0.0
  %v14087 = vmax.f32 %v14023, 0.0
  %v14088 = vmax.f32 %v14024, 0.0
  %v14089 = vmax.f32 %v14025, 0.0
  %v14090 = vmax.f32 %v14026, 0.0
  %v14091 = vmax.f32 %v14027, 0.0
  %v14092 = vmax.f32 %v14028, 0.0
  %v14093 = vmax.f32 %v14029, 0.0
  %v14094 = vmax.f32 %v14030, 0.0
  %v14095 = vmax.f32 %v14031, 0.0
  %v14096 = vmax.f32 %v14032, 0.0
  %14097 = vst.msk [vmem:[%s7] sm:$0xff] %vm90, %v14033
  %14098 = vst.msk [vmem:[%s7 + $0x8] sm:$0xff] %vm90, %v14034
  %14099 = vst.msk [vmem:[%s7 + $0x10] sm:$0xff] %vm90, %v14035
  %14100 = vst.msk [vmem:[%s7 + $0x18] sm:$0xff] %vm90, %v14036
  %14101 = vst.msk [vmem:[%s7 + $0x20] sm:$0xff] %vm90, %v14037
  %14102 = vst.msk [vmem:[%s7 + $0x28] sm:$0xff] %vm90, %v14038
  %14103 = vst.msk [vmem:[%s7 + $0x30] sm:$0xff] %vm90, %v14039
  %14104 = vst.msk [vmem:[%s7 + $0x38] sm:$0xff] %vm90, %v14040
  %14105 = vst.msk [vmem:[%s7 + $0x40] sm:$0xff] %vm90, %v14041
  %14106 = vst.msk [vmem:[%s7 + $0x48] sm:$0xff] %vm90, %v14042
  %14107 = vst.msk [vmem:[%s7 + $0x50] sm:$0xff] %vm90, %v14043
  %14108 = vst.msk [vmem:[%s7 + $0x58] sm:$0xff] %vm90, %v14044
  %14109 = vst.msk [vmem:[%s7 + $0x60] sm:$0xff] %vm90, %v14045
  %14110 = vst.msk [vmem:[%s7 + $0x68] sm:$0xff] %vm90, %v14046
  %14111 = vst.msk [vmem:[%s7 + $0x70] sm:$0xff] %vm90, %v14047
  %14112 = vst.msk [vmem:[%s7 + $0x78] sm:$0xff] %vm90, %v14048
  %14113 = vst.msk [vmem:[%s7 + $0x80] sm:$0xff] %vm90, %v14049
  %14114 = vst.msk [vmem:[%s7 + $0x88] sm:$0xff] %vm90, %v14050
  %14115 = vst.msk [vmem:[%s7 + $0x90] sm:$0xff] %vm90, %v14051
  %14116 = vst.msk [vmem:[%s7 + $0x98] sm:$0xff] %vm90, %v14052
  %14117 = vst.msk [vmem:[%s7 + $0xa0] sm:$0xff] %vm90, %v14053
  %14118 = vst.msk [vmem:[%s7 + $0xa8] sm:$0xff] %vm90, %v14054
  %14119 = vst.msk [vmem:[%s7 + $0xb0] sm:$0xff] %vm90, %v14055
  %14120 = vst.msk [vmem:[%s7 + $0xb8] sm:$0xff] %vm90, %v14056
  %14121 = vst.msk [vmem:[%s7 + $0xc0] sm:$0xff] %vm90, %v14057
  %14122 = vst.msk [vmem:[%s7 + $0xc8] sm:$0xff] %vm90, %v14058
  %14123 = vst.msk [vmem:[%s7 + $0xd0] sm:$0xff] %vm90, %v14059
  %14124 = vst.msk [vmem:[%s7 + $0xd8] sm:$0xff] %vm90, %v14060
  %14125 = vst.msk [vmem:[%s7 + $0xe0] sm:$0xff] %vm90, %v14061
  %14126 = vst.msk [vmem:[%s7 + $0xe8] sm:$0xff] %vm90, %v14062
  %14127 = vst.msk [vmem:[%s7 + $0xf0] sm:$0xff] %vm90, %v14063
  %14128 = vst.msk [vmem:[%s7 + $0xf8] sm:$0xff] %vm90, %v14064
  %14129 = vst.msk [vmem:[%s7 + $0x100] sm:$0xff] %vm90, %v14065
  %14130 = vst.msk [vmem:[%s7 + $0x108] sm:$0xff] %vm90, %v14066
  %14131 = vst.msk [vmem:[%s7 + $0x110] sm:$0xff] %vm90, %v14067
  %14132 = vst.msk [vmem:[%s7 + $0x118] sm:$0xff] %vm90, %v14068
  %14133 = vst.msk [vmem:[%s7 + $0x120] sm:$0xff] %vm90, %v14069
  %14134 = vst.msk [vmem:[%s7 + $0x128] sm:$0xff] %vm90, %v14070
  %14135 = vst.msk [vmem:[%s7 + $0x130] sm:$0xff] %vm90, %v14071
  %14136 = vst.msk [vmem:[%s7 + $0x138] sm:$0xff] %vm90, %v14072
  %14137 = vst.msk [vmem:[%s7 + $0x140] sm:$0xff] %vm90, %v14073
  %14138 = vst.msk [vmem:[%s7 + $0x148] sm:$0xff] %vm90, %v14074
  %14139 = vst.msk [vmem:[%s7 + $0x150] sm:$0xff] %vm90, %v14075
  %14140 = vst.msk [vmem:[%s7 + $0x158] sm:$0xff] %vm90, %v14076
  %14141 = vst.msk [vmem:[%s7 + $0x160] sm:$0xff] %vm90, %v14077
  %14142 = vst.msk [vmem:[%s7 + $0x168] sm:$0xff] %vm90, %v14078
  %14143 = vst.msk [vmem:[%s7 + $0x170] sm:$0xff] %vm90, %v14079
  %14144 = vst.msk [vmem:[%s7 + $0x178] sm:$0xff] %vm90, %v14080
  %14145 = vst.msk [vmem:[%s7 + $0x180] sm:$0xff] %vm90, %v14081
  %14146 = vst.msk [vmem:[%s7 + $0x188] sm:$0xff] %vm90, %v14082
  %14147 = vst.msk [vmem:[%s7 + $0x190] sm:$0xff] %vm90, %v14083
  %14148 = vst.msk [vmem:[%s7 + $0x198] sm:$0xff] %vm90, %v14084
  %14149 = vst.msk [vmem:[%s7 + $0x1a0] sm:$0xff] %vm90, %v14085
  %14150 = vst.msk [vmem:[%s7 + $0x1a8] sm:$0xff] %vm90, %v14086
  %14151 = vst.msk [vmem:[%s7 + $0x1b0] sm:$0xff] %vm90, %v14087
  %14152 = vst.msk [vmem:[%s7 + $0x1b8] sm:$0xff] %vm90, %v14088
  %14153 = vst.msk [vmem:[%s7 + $0x1c0] sm:$0xff] %vm90, %v14089
  %14154 = vst.msk [vmem:[%s7 + $0x1c8] sm:$0xff] %vm90, %v14090
  %14155 = vst.msk [vmem:[%s7 + $0x1d0] sm:$0xff] %vm90, %v14091
  %14156 = vst.msk [vmem:[%s7 + $0x1d8] sm:$0xff] %vm90, %v14092
  %14157 = vst.msk [vmem:[%s7 + $0x1e0] sm:$0xff] %vm90, %v14093
  %14158 = vst.msk [vmem:[%s7 + $0x1e8] sm:$0xff] %vm90, %v14094
  %14159 = vst.msk [vmem:[%s7 + $0x1f0] sm:$0xff] %vm90, %v14095
  %14160 = vst.msk [vmem:[%s7 + $0x1f8] sm:$0xff] %vm90, %v14096
  // Predicated region
  $region30: #{basic_block_forward.1} parent=0 // pred_check
    _
  $region31: #{basic_block_forward.1} parent=0 // pred_check_branch
    %14162 = sbr.rel (0) target = $region33
  $region32: #{basic_block_forward.1} parent=0 // pred_region
    _
  $region33: #{basic_block_forward.1} parent=0 // pred_fallthru
    _
  // Predicated region
  $region34: #{basic_block_forward.1} parent=0 // pred_check
    _
  $region35: #{basic_block_forward.1} parent=0 // pred_check_branch
    %14164 = sbr.rel (0) target = $region37
  $region36: #{basic_block_forward.1} parent=0 // pred_region
    _
  $region37: #{basic_block_forward.1} parent=0 // pred_fallthru
    _

</llo_original>
